<compile_context>
chip_gen: v6e
topology: v6e:2x2x1
jax: 0.10.0
libtpu: 0.0.40
codegen_flags: <defaults>
</compile_context>

<pallas_src>
import numpy as np

import jax
import jax.numpy as jnp
from jax import lax
from jax.experimental import pallas as pl
from jax.experimental.pallas import tpu as pltpu


# Static geometry of the scaled-down model.
B = 2               # real batch
H_IN = W_IN = 24    # input spatial
C_IN = 3
C1 = 8              # conv1 out channels
H1 = W1 = 12        # conv1 output spatial
C2 = 16             # conv2 out channels
H2 = W2 = 6         # conv2 output spatial
P2 = H2 * W2        # 36 output positions of conv2
BP = 8              # batch rows padded 2 -> 8 (sublane granule, M>=8)
K1 = 27             # conv1 im2col contraction (3*3*3)
K1P = 32            # padded to a multiple of 8
HID = 128           # classifier hidden width
BIT = 32            # hash code length
BITP = 128          # padded to a full lane width (lane-dense output store)


# ----------------------------------------------------------------------------
# Fused forward kernel: conv1 GEMM -> conv2 (selection-GEMM im2col + tap GEMMs)
# -> 3-layer MLP classifier.  Everything lives in VMEM / vregs.
# ----------------------------------------------------------------------------
def _hash_fwd_kernel(cols1_ref, w1_ref, b1_ref, s2_ref, w2_ref, b2_ref,
                     wc1_ref, bc1_ref, wc2_ref, bc2_ref, wc3_ref, bc3_ref,
                     o_ref):
    f32 = jnp.float32

    # ---- conv1 (im2col GEMM) + bias + ReLU --------------------------------
    # cols1: (B*H1*W1, K1P) = (288, 32); w1: (32, 8)  ->  h1: (288, 8)
    h1 = jnp.dot(cols1_ref[...], w1_ref[...], preferred_element_type=f32)
    h1 = jnp.maximum(h1 + b1_ref[...], 0.0)

    # ---- conv2: in-kernel im2col via constant 0/1 selection GEMMs ---------
    # For each of the 9 taps t=(dy,dx): s2[t] (288,288) gathers the right rows
    # of h1 (zero rows for spatial padding / padded batch slots), then a
    # (288,8)@(8,16) GEMM applies that tap's weights.  Accumulate over taps.
    pre2 = jnp.zeros((P2 * BP, C2), f32)                       # (288, 16)
    for t in range(9):
        cols2_t = jnp.dot(s2_ref[t], h1, preferred_element_type=f32)   # (288, 8)
        pre2 = pre2 + jnp.dot(cols2_t, w2_ref[t], preferred_element_type=f32)
    out2 = jnp.maximum(pre2 + b2_ref[...], 0.0)                # rows = (pos, padded batch)

    # ---- classifier -------------------------------------------------------
    # Linear(576->128)+ReLU, contracted as 36 position-blocks of 8 batch rows.
    # wc1[p] already contains the NCHW channel-major flatten permutation.
    acc = jnp.zeros((BP, HID), f32)                            # (8, 128)
    for p in range(P2):
        acc = acc + jnp.dot(out2[p * BP:(p + 1) * BP, :], wc1_ref[p],
                            preferred_element_type=f32)
    h = jnp.maximum(acc + bc1_ref[...], 0.0)
    # Linear(128->128)+ReLU
    h = jnp.maximum(jnp.dot(h, wc2_ref[...], preferred_element_type=f32)
                    + bc2_ref[...], 0.0)
    # Linear(128->bit) (bit padded to 128 -> full unmasked (8,128) store)
    o_ref[...] = (jnp.dot(h, wc3_ref[...], preferred_element_type=f32)
                  + bc3_ref[...])


def _full_spec(shape):
    n = len(shape)
    return pl.BlockSpec(shape, lambda i, _n=n: (0,) * _n)


# ----------------------------------------------------------------------------
# Wrapper: minimal XLA glue (conv1 im2col on the raw input) + one pallas_call
# ----------------------------------------------------------------------------
def _im2col_conv1(x):
    """x: (B, 3, 24, 24) NCHW  ->  cols1: (B*12*12, 32) f32.

    Column order is tap-major, channel-minor: col = (dy*3+dx)*3 + cin, matching
    the pre-reshaped conv1 weight matrix built at init."""
    xh = jnp.transpose(x, (0, 2, 3, 1))                       # NHWC (B,24,24,3)
    xp = jnp.pad(xh, ((0, 0), (1, 1), (1, 1), (0, 0)))        # pad=1
    taps = [xp[:, dy:dy + H_IN:2, dx:dx + W_IN:2, :]          # stride 2
            for dy in range(3) for dx in range(3)]
    cols = jnp.concatenate(taps, axis=-1).reshape(B * H1 * W1, K1)
    return jnp.pad(cols, ((0, 0), (0, K1P - K1)))             # K 27 -> 32


@jax.jit
def hash_model_forward(infer_params, x):
    ip = infer_params
    cols1 = _im2col_conv1(x)
    y = pl.pallas_call(
        _hash_fwd_kernel,
        out_shape=jax.ShapeDtypeStruct((BP, BITP), jnp.float32),
        grid=(1,),
        in_specs=[
            _full_spec((B * H1 * W1, K1P)),          # cols1 (288, 32)
            _full_spec((K1P, C1)),                   # w1m   (32, 8)
            _full_spec((1, C1)),                     # b1v
            _full_spec((9, P2 * BP, B * H1 * W1)),   # s2    (9, 288, 288)
            _full_spec((9, C1, C2)),                 # w2m   (9, 8, 16)
            _full_spec((1, C2)),                     # b2v
            _full_spec((P2, C2, HID)),               # wc1   (36, 16, 128)
            _full_spec((1, HID)),                    # bc1
            _full_spec((HID, HID)),                  # wc2
            _full_spec((1, HID)),                    # bc2
            _full_spec((HID, BITP)),                 # wc3   (128, 128)
            _full_spec((1, BITP)),                   # bc3
        ],
        out_specs=_full_spec((BP, BITP)),
        compiler_params=pltpu.CompilerParams(
            dimension_semantics=("arbitrary",),
            vmem_limit_bytes=32 * 1024 * 1024),
    )(cols1, ip["w1m"], ip["b1v"], ip["s2"], ip["w2m"], ip["b2v"],
      ip["wc1"], ip["bc1"], ip["wc2"], ip["bc2"], ip["wc3"], ip["bc3"])
    # Strip padding: real batch rows [0:2], real hash bits [0:32].
    return y[:B, :BIT]


# ----------------------------------------------------------------------------
# Parameters (PyTorch layout) and one-time inference-time preparation
# ----------------------------------------------------------------------------
def init_params(key):
    ks = jax.random.split(key, 10)
    s = 0.1
    return {
        # stand-in for external `original_model.features` (scaled AlexNet-ish)
        "conv1_w": s * jax.random.normal(ks[0], (C1, C_IN, 3, 3), jnp.float32),
        "conv1_b": s * jax.random.normal(ks[1], (C1,), jnp.float32),
        "conv2_w": s * jax.random.normal(ks[2], (C2, C1, 3, 3), jnp.float32),
        "conv2_b": s * jax.random.normal(ks[3], (C2,), jnp.float32),
        # classifier Linears (PyTorch convention: weight is (out, in))
        "cl1_w": s * jax.random.normal(ks[4], (HID, C2 * P2), jnp.float32),
        "cl1_b": s * jax.random.normal(ks[5], (HID,), jnp.float32),
        "cl2_w": s * jax.random.normal(ks[6], (HID, HID), jnp.float32),
        "cl2_b": s * jax.random.normal(ks[7], (HID,), jnp.float32),
        "cl3_w": s * jax.random.normal(ks[8], (BIT, HID), jnp.float32),
        "cl3_b": s * jax.random.normal(ks[9], (BIT,), jnp.float32),
    }


def _build_conv2_selection():
    """0/1 matrix that performs conv2's im2col row-gather inside the kernel.

    s2[t, p*BP + b, b*H1*W1 + iy*W1 + ix] = 1 for tap t=(dy,dx), output pos
    p=(oy,ox), real batch b<2, with iy=2*oy+dy-1, ix=2*ox+dx-1 (zero rows for
    spatial padding and for padded batch slots b>=2)."""
    s = np.zeros((9, P2 * BP, B * H1 * W1), np.float32)
    for dy in range(3):
        for dx in range(3):
            t = dy * 3 + dx
            for oy in range(H2):
                for ox in range(W2):
                    p = oy * W2 + ox
                    iy, ix = 2 * oy + dy - 1, 2 * ox + dx - 1
                    if 0 <= iy < H1 and 0 <= ix < W1:
                        for b in range(B):
                            s[t, p * BP + b, b * H1 * W1 + iy * W1 + ix] = 1.0
    return jnp.asarray(s)


def prepare_inference_params(p):
    """Pre-transpose / pre-pad all weights once (outside the per-call path)."""
    # conv1 weight -> (kh,kw,cin,cout) -> (27, 8) -> pad K to 32
    w1m = jnp.transpose(p["conv1_w"], (2, 3, 1, 0)).reshape(K1, C1)
    w1m = jnp.pad(w1m, ((0, K1P - K1), (0, 0)))
    # conv2 weight -> per-tap (cin, cout): (9, 8, 16)
    w2m = jnp.transpose(p["conv2_w"], (2, 3, 1, 0)).reshape(9, C1, C2)
    # classifier-1 weight: fold the NCHW channel-major flatten permutation in:
    # wc1[pos, c, j] = cl1_w[j, c*36 + pos]
    wc1 = jnp.transpose(p["cl1_w"].reshape(HID, C2, P2), (2, 1, 0))
    # classifier-3: pad bit 32 -> 128 on the lane axis
    wc3 = jnp.pad(p["cl3_w"].T, ((0, 0), (0, BITP - BIT)))
    bc3 = jnp.pad(p["cl3_b"], (0, BITP - BIT)).reshape(1, BITP)
    return {
        "w1m": w1m, "b1v": p["conv1_b"].reshape(1, C1),
        "s2": _build_conv2_selection(),
        "w2m": w2m, "b2v": p["conv2_b"].reshape(1, C2),
        "wc1": wc1, "bc1": p["cl1_b"].reshape(1, HID),
        "wc2": p["cl2_w"].T, "bc2": p["cl2_b"].reshape(1, HID),
        "wc3": wc3, "bc3": bc3,
    }


# ----------------------------------------------------------------------------
# Pure-JAX reference (same math, PyTorch semantics) for a correctness check
# ----------------------------------------------------------------------------
def reference_forward(p, x):
    hi = lax.Precision.HIGHEST
    dn = ("NCHW", "OIHW", "NCHW")
    f = lax.conv_general_dilated(x, p["conv1_w"], (2, 2), ((1, 1), (1, 1)),
                                 dimension_numbers=dn, precision=hi)
    f = jnp.maximum(f + p["conv1_b"][None, :, None, None], 0.0)
    f = lax.conv_general_dilated(f, p["conv2_w"], (2, 2), ((1, 1), (1, 1)),
                                 dimension_numbers=dn, precision=hi)
    f = jnp.maximum(f + p["conv2_b"][None, :, None, None], 0.0)
    f = f.reshape(f.shape[0], -1)                 # f.view(B, C*H*W), NCHW order
    # TODO(synk): nn.Dropout training-mode stochasticity not implemented
    # (inference semantics: identity).
    h = jnp.maximum(jnp.dot(f, p["cl1_w"].T, precision=hi) + p["cl1_b"], 0.0)
    h = jnp.maximum(jnp.dot(h, p["cl2_w"].T, precision=hi) + p["cl2_b"], 0.0)
    return jnp.dot(h, p["cl3_w"].T, precision=hi) + p["cl3_b"]


if __name__ == "__main__":
    key = jax.random.PRNGKey(0)
    pkey, xkey = jax.random.split(key)
    params = init_params(pkey)
    infer_params = prepare_inference_params(params)   # one-time constant prep
    x = jax.random.normal(xkey, (B, C_IN, H_IN, W_IN), jnp.float32)  # NCHW

    y = hash_model_forward(infer_params, x)
    y = jax.block_until_ready(y)
    assert y.shape == (B, BIT) and y.dtype == jnp.float32

    y_ref = reference_forward(params, x)
    err = float(jnp.max(jnp.abs(y - y_ref)))
    assert err < 3e-2, f"mismatch vs pure-JAX reference: max|diff|={err}"

    print("KERNEL_OK")
</pallas_src>

<mosaic_0001>
module attributes {stable_mosaic.version = 11 : i64} {
  func.func @_hash_fwd_kernel(%arg0: i32, %arg1: memref<288x32xf32, #tpu.memory_space<vmem>>, %arg2: memref<32x8xf32, #tpu.memory_space<vmem>>, %arg3: memref<1x8xf32, #tpu.memory_space<vmem>>, %arg4: memref<9x288x288xf32, #tpu.memory_space<vmem>>, %arg5: memref<9x8x16xf32, #tpu.memory_space<vmem>>, %arg6: memref<1x16xf32, #tpu.memory_space<vmem>>, %arg7: memref<36x16x128xf32, #tpu.memory_space<vmem>>, %arg8: memref<1x128xf32, #tpu.memory_space<vmem>>, %arg9: memref<128x128xf32, #tpu.memory_space<vmem>>, %arg10: memref<1x128xf32, #tpu.memory_space<vmem>>, %arg11: memref<128x128xf32, #tpu.memory_space<vmem>>, %arg12: memref<1x128xf32, #tpu.memory_space<vmem>>, %arg13: memref<8x128xf32, #tpu.memory_space<vmem>>) attributes {dimension_semantics = [#tpu.dimension_semantics<arbitrary>], iteration_bounds = array<i64: 1>, scalar_prefetch = 0 : i64, scratch_operands = 0 : i64, tpu.core_type = #tpu.core_type<tc>, window_params = [{pipeline_mode = #tpu.pipeline_mode<synchronous>, transform_indices = @transform_0, window_bounds = array<i64: 288, 32>}, {pipeline_mode = #tpu.pipeline_mode<synchronous>, transform_indices = @transform_1, window_bounds = array<i64: 32, 8>}, {pipeline_mode = #tpu.pipeline_mode<synchronous>, transform_indices = @transform_2, window_bounds = array<i64: 1, 8>}, {pipeline_mode = #tpu.pipeline_mode<synchronous>, transform_indices = @transform_3, window_bounds = array<i64: 9, 288, 288>}, {pipeline_mode = #tpu.pipeline_mode<synchronous>, transform_indices = @transform_4, window_bounds = array<i64: 9, 8, 16>}, {pipeline_mode = #tpu.pipeline_mode<synchronous>, transform_indices = @transform_5, window_bounds = array<i64: 1, 16>}, {pipeline_mode = #tpu.pipeline_mode<synchronous>, transform_indices = @transform_6, window_bounds = array<i64: 36, 16, 128>}, {pipeline_mode = #tpu.pipeline_mode<synchronous>, transform_indices = @transform_7, window_bounds = array<i64: 1, 128>}, {pipeline_mode = #tpu.pipeline_mode<synchronous>, transform_indices = @transform_8, window_bounds = array<i64: 128, 128>}, {pipeline_mode = #tpu.pipeline_mode<synchronous>, transform_indices = @transform_9, window_bounds = array<i64: 1, 128>}, {pipeline_mode = #tpu.pipeline_mode<synchronous>, transform_indices = @transform_10, window_bounds = array<i64: 128, 128>}, {pipeline_mode = #tpu.pipeline_mode<synchronous>, transform_indices = @transform_11, window_bounds = array<i64: 1, 128>}, {pipeline_mode = #tpu.pipeline_mode<synchronous>, transform_indices = @transform_12, window_bounds = array<i64: 8, 128>}]} {
    %c0 = arith.constant 0 : index
    %c0_0 = arith.constant 0 : index
    %0 = vector.load %arg1[%c0, %c0_0] : memref<288x32xf32, #tpu.memory_space<vmem>>, vector<288x32xf32>
    %c0_1 = arith.constant 0 : index
    %c0_2 = arith.constant 0 : index
    %1 = vector.load %arg2[%c0_1, %c0_2] : memref<32x8xf32, #tpu.memory_space<vmem>>, vector<32x8xf32>
    %cst = arith.constant dense<0.000000e+00> : vector<288x8xf32>
    %2 = tpu.matmul %0, %1, %cst {dimension_numbers = #tpu.dot_dimension_numbers<[1], [0], [0], [1], [0, 0, 1, 1], [], []>} : vector<288x32xf32>, vector<32x8xf32>, vector<288x8xf32> -> vector<288x8xf32>
    %c0_3 = arith.constant 0 : index
    %c0_4 = arith.constant 0 : index
    %3 = vector.load %arg3[%c0_3, %c0_4] : memref<1x8xf32, #tpu.memory_space<vmem>>, vector<1x8xf32>
    %4 = vector.broadcast %3 : vector<1x8xf32> to vector<288x8xf32>
    %5 = arith.addf %2, %4 : vector<288x8xf32>
    %cst_5 = arith.constant 0.000000e+00 : f32
    %6 = vector.broadcast %cst_5 : f32 to vector<288x8xf32>
    %7 = arith.maximumf %5, %6 : vector<288x8xf32>
    %cst_6 = arith.constant 0.000000e+00 : f32
    %8 = vector.broadcast %cst_6 : f32 to vector<288x16xf32>
    %c0_7 = arith.constant 0 : index
    %c0_8 = arith.constant 0 : index
    %c0_9 = arith.constant 0 : index
    %9 = vector.load %arg4[%c0_7, %c0_8, %c0_9] : memref<9x288x288xf32, #tpu.memory_space<vmem>>, vector<1x288x288xf32>
    %10 = vector.shape_cast %9 : vector<1x288x288xf32> to vector<288x288xf32>
    %cst_10 = arith.constant dense<0.000000e+00> : vector<288x8xf32>
    %11 = tpu.matmul %10, %7, %cst_10 {dimension_numbers = #tpu.dot_dimension_numbers<[1], [0], [0], [1], [0, 0, 1, 1], [], []>} : vector<288x288xf32>, vector<288x8xf32>, vector<288x8xf32> -> vector<288x8xf32>
    %c0_11 = arith.constant 0 : index
    %c0_12 = arith.constant 0 : index
    %c0_13 = arith.constant 0 : index
    %12 = vector.load %arg5[%c0_11, %c0_12, %c0_13] : memref<9x8x16xf32, #tpu.memory_space<vmem>>, vector<1x8x16xf32>
    %13 = vector.shape_cast %12 : vector<1x8x16xf32> to vector<8x16xf32>
    %cst_14 = arith.constant dense<0.000000e+00> : vector<288x16xf32>
    %14 = tpu.matmul %11, %13, %cst_14 {dimension_numbers = #tpu.dot_dimension_numbers<[1], [0], [0], [1], [0, 0, 1, 1], [], []>} : vector<288x8xf32>, vector<8x16xf32>, vector<288x16xf32> -> vector<288x16xf32>
    %15 = arith.addf %8, %14 : vector<288x16xf32>
    %c1 = arith.constant 1 : index
    %c0_15 = arith.constant 0 : index
    %c0_16 = arith.constant 0 : index
    %16 = vector.load %arg4[%c1, %c0_15, %c0_16] : memref<9x288x288xf32, #tpu.memory_space<vmem>>, vector<1x288x288xf32>
    %17 = vector.shape_cast %16 : vector<1x288x288xf32> to vector<288x288xf32>
    %cst_17 = arith.constant dense<0.000000e+00> : vector<288x8xf32>
    %18 = tpu.matmul %17, %7, %cst_17 {dimension_numbers = #tpu.dot_dimension_numbers<[1], [0], [0], [1], [0, 0, 1, 1], [], []>} : vector<288x288xf32>, vector<288x8xf32>, vector<288x8xf32> -> vector<288x8xf32>
    %c1_18 = arith.constant 1 : index
    %c0_19 = arith.constant 0 : index
    %c0_20 = arith.constant 0 : index
    %19 = vector.load %arg5[%c1_18, %c0_19, %c0_20] : memref<9x8x16xf32, #tpu.memory_space<vmem>>, vector<1x8x16xf32>
    %20 = vector.shape_cast %19 : vector<1x8x16xf32> to vector<8x16xf32>
    %cst_21 = arith.constant dense<0.000000e+00> : vector<288x16xf32>
    %21 = tpu.matmul %18, %20, %cst_21 {dimension_numbers = #tpu.dot_dimension_numbers<[1], [0], [0], [1], [0, 0, 1, 1], [], []>} : vector<288x8xf32>, vector<8x16xf32>, vector<288x16xf32> -> vector<288x16xf32>
    %22 = arith.addf %15, %21 : vector<288x16xf32>
    %c2 = arith.constant 2 : index
    %c0_22 = arith.constant 0 : index
    %c0_23 = arith.constant 0 : index
    %23 = vector.load %arg4[%c2, %c0_22, %c0_23] : memref<9x288x288xf32, #tpu.memory_space<vmem>>, vector<1x288x288xf32>
    %24 = vector.shape_cast %23 : vector<1x288x288xf32> to vector<288x288xf32>
    %cst_24 = arith.constant dense<0.000000e+00> : vector<288x8xf32>
    %25 = tpu.matmul %24, %7, %cst_24 {dimension_numbers = #tpu.dot_dimension_numbers<[1], [0], [0], [1], [0, 0, 1, 1], [], []>} : vector<288x288xf32>, vector<288x8xf32>, vector<288x8xf32> -> vector<288x8xf32>
    %c2_25 = arith.constant 2 : index
    %c0_26 = arith.constant 0 : index
    %c0_27 = arith.constant 0 : index
    %26 = vector.load %arg5[%c2_25, %c0_26, %c0_27] : memref<9x8x16xf32, #tpu.memory_space<vmem>>, vector<1x8x16xf32>
    %27 = vector.shape_cast %26 : vector<1x8x16xf32> to vector<8x16xf32>
    %cst_28 = arith.constant dense<0.000000e+00> : vector<288x16xf32>
    %28 = tpu.matmul %25, %27, %cst_28 {dimension_numbers = #tpu.dot_dimension_numbers<[1], [0], [0], [1], [0, 0, 1, 1], [], []>} : vector<288x8xf32>, vector<8x16xf32>, vector<288x16xf32> -> vector<288x16xf32>
    %29 = arith.addf %22, %28 : vector<288x16xf32>
    %c3 = arith.constant 3 : index
    %c0_29 = arith.constant 0 : index
    %c0_30 = arith.constant 0 : index
    %30 = vector.load %arg4[%c3, %c0_29, %c0_30] : memref<9x288x288xf32, #tpu.memory_space<vmem>>, vector<1x288x288xf32>
    %31 = vector.shape_cast %30 : vector<1x288x288xf32> to vector<288x288xf32>
    %cst_31 = arith.constant dense<0.000000e+00> : vector<288x8xf32>
    %32 = tpu.matmul %31, %7, %cst_31 {dimension_numbers = #tpu.dot_dimension_numbers<[1], [0], [0], [1], [0, 0, 1, 1], [], []>} : vector<288x288xf32>, vector<288x8xf32>, vector<288x8xf32> -> vector<288x8xf32>
    %c3_32 = arith.constant 3 : index
    %c0_33 = arith.constant 0 : index
    %c0_34 = arith.constant 0 : index
    %33 = vector.load %arg5[%c3_32, %c0_33, %c0_34] : memref<9x8x16xf32, #tpu.memory_space<vmem>>, vector<1x8x16xf32>
    %34 = vector.shape_cast %33 : vector<1x8x16xf32> to vector<8x16xf32>
    %cst_35 = arith.constant dense<0.000000e+00> : vector<288x16xf32>
    %35 = tpu.matmul %32, %34, %cst_35 {dimension_numbers = #tpu.dot_dimension_numbers<[1], [0], [0], [1], [0, 0, 1, 1], [], []>} : vector<288x8xf32>, vector<8x16xf32>, vector<288x16xf32> -> vector<288x16xf32>
    %36 = arith.addf %29, %35 : vector<288x16xf32>
    %c4 = arith.constant 4 : index
    %c0_36 = arith.constant 0 : index
    %c0_37 = arith.constant 0 : index
    %37 = vector.load %arg4[%c4, %c0_36, %c0_37] : memref<9x288x288xf32, #tpu.memory_space<vmem>>, vector<1x288x288xf32>
    %38 = vector.shape_cast %37 : vector<1x288x288xf32> to vector<288x288xf32>
    %cst_38 = arith.constant dense<0.000000e+00> : vector<288x8xf32>
    %39 = tpu.matmul %38, %7, %cst_38 {dimension_numbers = #tpu.dot_dimension_numbers<[1], [0], [0], [1], [0, 0, 1, 1], [], []>} : vector<288x288xf32>, vector<288x8xf32>, vector<288x8xf32> -> vector<288x8xf32>
    %c4_39 = arith.constant 4 : index
    %c0_40 = arith.constant 0 : index
    %c0_41 = arith.constant 0 : index
    %40 = vector.load %arg5[%c4_39, %c0_40, %c0_41] : memref<9x8x16xf32, #tpu.memory_space<vmem>>, vector<1x8x16xf32>
    %41 = vector.shape_cast %40 : vector<1x8x16xf32> to vector<8x16xf32>
    %cst_42 = arith.constant dense<0.000000e+00> : vector<288x16xf32>
    %42 = tpu.matmul %39, %41, %cst_42 {dimension_numbers = #tpu.dot_dimension_numbers<[1], [0], [0], [1], [0, 0, 1, 1], [], []>} : vector<288x8xf32>, vector<8x16xf32>, vector<288x16xf32> -> vector<288x16xf32>
    %43 = arith.addf %36, %42 : vector<288x16xf32>
    %c5 = arith.constant 5 : index
    %c0_43 = arith.constant 0 : index
    %c0_44 = arith.constant 0 : index
    %44 = vector.load %arg4[%c5, %c0_43, %c0_44] : memref<9x288x288xf32, #tpu.memory_space<vmem>>, vector<1x288x288xf32>
    %45 = vector.shape_cast %44 : vector<1x288x288xf32> to vector<288x288xf32>
    %cst_45 = arith.constant dense<0.000000e+00> : vector<288x8xf32>
    %46 = tpu.matmul %45, %7, %cst_45 {dimension_numbers = #tpu.dot_dimension_numbers<[1], [0], [0], [1], [0, 0, 1, 1], [], []>} : vector<288x288xf32>, vector<288x8xf32>, vector<288x8xf32> -> vector<288x8xf32>
    %c5_46 = arith.constant 5 : index
    %c0_47 = arith.constant 0 : index
    %c0_48 = arith.constant 0 : index
    %47 = vector.load %arg5[%c5_46, %c0_47, %c0_48] : memref<9x8x16xf32, #tpu.memory_space<vmem>>, vector<1x8x16xf32>
    %48 = vector.shape_cast %47 : vector<1x8x16xf32> to vector<8x16xf32>
    %cst_49 = arith.constant dense<0.000000e+00> : vector<288x16xf32>
    %49 = tpu.matmul %46, %48, %cst_49 {dimension_numbers = #tpu.dot_dimension_numbers<[1], [0], [0], [1], [0, 0, 1, 1], [], []>} : vector<288x8xf32>, vector<8x16xf32>, vector<288x16xf32> -> vector<288x16xf32>
    %50 = arith.addf %43, %49 : vector<288x16xf32>
    %c6 = arith.constant 6 : index
    %c0_50 = arith.constant 0 : index
    %c0_51 = arith.constant 0 : index
    %51 = vector.load %arg4[%c6, %c0_50, %c0_51] : memref<9x288x288xf32, #tpu.memory_space<vmem>>, vector<1x288x288xf32>
    %52 = vector.shape_cast %51 : vector<1x288x288xf32> to vector<288x288xf32>
    %cst_52 = arith.constant dense<0.000000e+00> : vector<288x8xf32>
    %53 = tpu.matmul %52, %7, %cst_52 {dimension_numbers = #tpu.dot_dimension_numbers<[1], [0], [0], [1], [0, 0, 1, 1], [], []>} : vector<288x288xf32>, vector<288x8xf32>, vector<288x8xf32> -> vector<288x8xf32>
    %c6_53 = arith.constant 6 : index
    %c0_54 = arith.constant 0 : index
    %c0_55 = arith.constant 0 : index
    %54 = vector.load %arg5[%c6_53, %c0_54, %c0_55] : memref<9x8x16xf32, #tpu.memory_space<vmem>>, vector<1x8x16xf32>
    %55 = vector.shape_cast %54 : vector<1x8x16xf32> to vector<8x16xf32>
    %cst_56 = arith.constant dense<0.000000e+00> : vector<288x16xf32>
    %56 = tpu.matmul %53, %55, %cst_56 {dimension_numbers = #tpu.dot_dimension_numbers<[1], [0], [0], [1], [0, 0, 1, 1], [], []>} : vector<288x8xf32>, vector<8x16xf32>, vector<288x16xf32> -> vector<288x16xf32>
    %57 = arith.addf %50, %56 : vector<288x16xf32>
    %c7 = arith.constant 7 : index
    %c0_57 = arith.constant 0 : index
    %c0_58 = arith.constant 0 : index
    %58 = vector.load %arg4[%c7, %c0_57, %c0_58] : memref<9x288x288xf32, #tpu.memory_space<vmem>>, vector<1x288x288xf32>
    %59 = vector.shape_cast %58 : vector<1x288x288xf32> to vector<288x288xf32>
    %cst_59 = arith.constant dense<0.000000e+00> : vector<288x8xf32>
    %60 = tpu.matmul %59, %7, %cst_59 {dimension_numbers = #tpu.dot_dimension_numbers<[1], [0], [0], [1], [0, 0, 1, 1], [], []>} : vector<288x288xf32>, vector<288x8xf32>, vector<288x8xf32> -> vector<288x8xf32>
    %c7_60 = arith.constant 7 : index
    %c0_61 = arith.constant 0 : index
    %c0_62 = arith.constant 0 : index
    %61 = vector.load %arg5[%c7_60, %c0_61, %c0_62] : memref<9x8x16xf32, #tpu.memory_space<vmem>>, vector<1x8x16xf32>
    %62 = vector.shape_cast %61 : vector<1x8x16xf32> to vector<8x16xf32>
    %cst_63 = arith.constant dense<0.000000e+00> : vector<288x16xf32>
    %63 = tpu.matmul %60, %62, %cst_63 {dimension_numbers = #tpu.dot_dimension_numbers<[1], [0], [0], [1], [0, 0, 1, 1], [], []>} : vector<288x8xf32>, vector<8x16xf32>, vector<288x16xf32> -> vector<288x16xf32>
    %64 = arith.addf %57, %63 : vector<288x16xf32>
    %c8 = arith.constant 8 : index
    %c0_64 = arith.constant 0 : index
    %c0_65 = arith.constant 0 : index
    %65 = vector.load %arg4[%c8, %c0_64, %c0_65] : memref<9x288x288xf32, #tpu.memory_space<vmem>>, vector<1x288x288xf32>
    %66 = vector.shape_cast %65 : vector<1x288x288xf32> to vector<288x288xf32>
    %cst_66 = arith.constant dense<0.000000e+00> : vector<288x8xf32>
    %67 = tpu.matmul %66, %7, %cst_66 {dimension_numbers = #tpu.dot_dimension_numbers<[1], [0], [0], [1], [0, 0, 1, 1], [], []>} : vector<288x288xf32>, vector<288x8xf32>, vector<288x8xf32> -> vector<288x8xf32>
    %c8_67 = arith.constant 8 : index
    %c0_68 = arith.constant 0 : index
    %c0_69 = arith.constant 0 : index
    %68 = vector.load %arg5[%c8_67, %c0_68, %c0_69] : memref<9x8x16xf32, #tpu.memory_space<vmem>>, vector<1x8x16xf32>
    %69 = vector.shape_cast %68 : vector<1x8x16xf32> to vector<8x16xf32>
    %cst_70 = arith.constant dense<0.000000e+00> : vector<288x16xf32>
    %70 = tpu.matmul %67, %69, %cst_70 {dimension_numbers = #tpu.dot_dimension_numbers<[1], [0], [0], [1], [0, 0, 1, 1], [], []>} : vector<288x8xf32>, vector<8x16xf32>, vector<288x16xf32> -> vector<288x16xf32>
    %71 = arith.addf %64, %70 : vector<288x16xf32>
    %c0_71 = arith.constant 0 : index
    %c0_72 = arith.constant 0 : index
    %72 = vector.load %arg6[%c0_71, %c0_72] : memref<1x16xf32, #tpu.memory_space<vmem>>, vector<1x16xf32>
    %73 = vector.broadcast %72 : vector<1x16xf32> to vector<288x16xf32>
    %74 = arith.addf %71, %73 : vector<288x16xf32>
    %cst_73 = arith.constant 0.000000e+00 : f32
    %75 = vector.broadcast %cst_73 : f32 to vector<288x16xf32>
    %76 = arith.maximumf %74, %75 : vector<288x16xf32>
    %cst_74 = arith.constant 0.000000e+00 : f32
    %77 = vector.broadcast %cst_74 : f32 to vector<8x128xf32>
    %78 = vector.extract_strided_slice %76 {offsets = [0, 0], sizes = [8, 16], strides = [1, 1]} : vector<288x16xf32> to vector<8x16xf32>
    %c0_75 = arith.constant 0 : index
    %c0_76 = arith.constant 0 : index
    %c0_77 = arith.constant 0 : index
    %79 = vector.load %arg7[%c0_75, %c0_76, %c0_77] : memref<36x16x128xf32, #tpu.memory_space<vmem>>, vector<1x16x128xf32>
    %80 = vector.shape_cast %79 : vector<1x16x128xf32> to vector<16x128xf32>
    %cst_78 = arith.constant dense<0.000000e+00> : vector<8x128xf32>
    %81 = tpu.matmul %78, %80, %cst_78 {dimension_numbers = #tpu.dot_dimension_numbers<[1], [0], [0], [1], [0, 0, 1, 1], [], []>} : vector<8x16xf32>, vector<16x128xf32>, vector<8x128xf32> -> vector<8x128xf32>
    %82 = arith.addf %77, %81 : vector<8x128xf32>
    %83 = vector.extract_strided_slice %76 {offsets = [8, 0], sizes = [8, 16], strides = [1, 1]} : vector<288x16xf32> to vector<8x16xf32>
    %c1_79 = arith.constant 1 : index
    %c0_80 = arith.constant 0 : index
    %c0_81 = arith.constant 0 : index
    %84 = vector.load %arg7[%c1_79, %c0_80, %c0_81] : memref<36x16x128xf32, #tpu.memory_space<vmem>>, vector<1x16x128xf32>
    %85 = vector.shape_cast %84 : vector<1x16x128xf32> to vector<16x128xf32>
    %cst_82 = arith.constant dense<0.000000e+00> : vector<8x128xf32>
    %86 = tpu.matmul %83, %85, %cst_82 {dimension_numbers = #tpu.dot_dimension_numbers<[1], [0], [0], [1], [0, 0, 1, 1], [], []>} : vector<8x16xf32>, vector<16x128xf32>, vector<8x128xf32> -> vector<8x128xf32>
    %87 = arith.addf %82, %86 : vector<8x128xf32>
    %88 = vector.extract_strided_slice %76 {offsets = [16, 0], sizes = [8, 16], strides = [1, 1]} : vector<288x16xf32> to vector<8x16xf32>
    %c2_83 = arith.constant 2 : index
    %c0_84 = arith.constant 0 : index
    %c0_85 = arith.constant 0 : index
    %89 = vector.load %arg7[%c2_83, %c0_84, %c0_85] : memref<36x16x128xf32, #tpu.memory_space<vmem>>, vector<1x16x128xf32>
    %90 = vector.shape_cast %89 : vector<1x16x128xf32> to vector<16x128xf32>
    %cst_86 = arith.constant dense<0.000000e+00> : vector<8x128xf32>
    %91 = tpu.matmul %88, %90, %cst_86 {dimension_numbers = #tpu.dot_dimension_numbers<[1], [0], [0], [1], [0, 0, 1, 1], [], []>} : vector<8x16xf32>, vector<16x128xf32>, vector<8x128xf32> -> vector<8x128xf32>
    %92 = arith.addf %87, %91 : vector<8x128xf32>
    %93 = vector.extract_strided_slice %76 {offsets = [24, 0], sizes = [8, 16], strides = [1, 1]} : vector<288x16xf32> to vector<8x16xf32>
    %c3_87 = arith.constant 3 : index
    %c0_88 = arith.constant 0 : index
    %c0_89 = arith.constant 0 : index
    %94 = vector.load %arg7[%c3_87, %c0_88, %c0_89] : memref<36x16x128xf32, #tpu.memory_space<vmem>>, vector<1x16x128xf32>
    %95 = vector.shape_cast %94 : vector<1x16x128xf32> to vector<16x128xf32>
    %cst_90 = arith.constant dense<0.000000e+00> : vector<8x128xf32>
    %96 = tpu.matmul %93, %95, %cst_90 {dimension_numbers = #tpu.dot_dimension_numbers<[1], [0], [0], [1], [0, 0, 1, 1], [], []>} : vector<8x16xf32>, vector<16x128xf32>, vector<8x128xf32> -> vector<8x128xf32>
    %97 = arith.addf %92, %96 : vector<8x128xf32>
    %98 = vector.extract_strided_slice %76 {offsets = [32, 0], sizes = [8, 16], strides = [1, 1]} : vector<288x16xf32> to vector<8x16xf32>
    %c4_91 = arith.constant 4 : index
    %c0_92 = arith.constant 0 : index
    %c0_93 = arith.constant 0 : index
    %99 = vector.load %arg7[%c4_91, %c0_92, %c0_93] : memref<36x16x128xf32, #tpu.memory_space<vmem>>, vector<1x16x128xf32>
    %100 = vector.shape_cast %99 : vector<1x16x128xf32> to vector<16x128xf32>
    %cst_94 = arith.constant dense<0.000000e+00> : vector<8x128xf32>
    %101 = tpu.matmul %98, %100, %cst_94 {dimension_numbers = #tpu.dot_dimension_numbers<[1], [0], [0], [1], [0, 0, 1, 1], [], []>} : vector<8x16xf32>, vector<16x128xf32>, vector<8x128xf32> -> vector<8x128xf32>
    %102 = arith.addf %97, %101 : vector<8x128xf32>
    %103 = vector.extract_strided_slice %76 {offsets = [40, 0], sizes = [8, 16], strides = [1, 1]} : vector<288x16xf32> to vector<8x16xf32>
    %c5_95 = arith.constant 5 : index
    %c0_96 = arith.constant 0 : index
    %c0_97 = arith.constant 0 : index
    %104 = vector.load %arg7[%c5_95, %c0_96, %c0_97] : memref<36x16x128xf32, #tpu.memory_space<vmem>>, vector<1x16x128xf32>
    %105 = vector.shape_cast %104 : vector<1x16x128xf32> to vector<16x128xf32>
    %cst_98 = arith.constant dense<0.000000e+00> : vector<8x128xf32>
    %106 = tpu.matmul %103, %105, %cst_98 {dimension_numbers = #tpu.dot_dimension_numbers<[1], [0], [0], [1], [0, 0, 1, 1], [], []>} : vector<8x16xf32>, vector<16x128xf32>, vector<8x128xf32> -> vector<8x128xf32>
    %107 = arith.addf %102, %106 : vector<8x128xf32>
    %108 = vector.extract_strided_slice %76 {offsets = [48, 0], sizes = [8, 16], strides = [1, 1]} : vector<288x16xf32> to vector<8x16xf32>
    %c6_99 = arith.constant 6 : index
    %c0_100 = arith.constant 0 : index
    %c0_101 = arith.constant 0 : index
    %109 = vector.load %arg7[%c6_99, %c0_100, %c0_101] : memref<36x16x128xf32, #tpu.memory_space<vmem>>, vector<1x16x128xf32>
    %110 = vector.shape_cast %109 : vector<1x16x128xf32> to vector<16x128xf32>
    %cst_102 = arith.constant dense<0.000000e+00> : vector<8x128xf32>
    %111 = tpu.matmul %108, %110, %cst_102 {dimension_numbers = #tpu.dot_dimension_numbers<[1], [0], [0], [1], [0, 0, 1, 1], [], []>} : vector<8x16xf32>, vector<16x128xf32>, vector<8x128xf32> -> vector<8x128xf32>
    %112 = arith.addf %107, %111 : vector<8x128xf32>
    %113 = vector.extract_strided_slice %76 {offsets = [56, 0], sizes = [8, 16], strides = [1, 1]} : vector<288x16xf32> to vector<8x16xf32>
    %c7_103 = arith.constant 7 : index
    %c0_104 = arith.constant 0 : index
    %c0_105 = arith.constant 0 : index
    %114 = vector.load %arg7[%c7_103, %c0_104, %c0_105] : memref<36x16x128xf32, #tpu.memory_space<vmem>>, vector<1x16x128xf32>
    %115 = vector.shape_cast %114 : vector<1x16x128xf32> to vector<16x128xf32>
    %cst_106 = arith.constant dense<0.000000e+00> : vector<8x128xf32>
    %116 = tpu.matmul %113, %115, %cst_106 {dimension_numbers = #tpu.dot_dimension_numbers<[1], [0], [0], [1], [0, 0, 1, 1], [], []>} : vector<8x16xf32>, vector<16x128xf32>, vector<8x128xf32> -> vector<8x128xf32>
    %117 = arith.addf %112, %116 : vector<8x128xf32>
    %118 = vector.extract_strided_slice %76 {offsets = [64, 0], sizes = [8, 16], strides = [1, 1]} : vector<288x16xf32> to vector<8x16xf32>
    %c8_107 = arith.constant 8 : index
    %c0_108 = arith.constant 0 : index
    %c0_109 = arith.constant 0 : index
    %119 = vector.load %arg7[%c8_107, %c0_108, %c0_109] : memref<36x16x128xf32, #tpu.memory_space<vmem>>, vector<1x16x128xf32>
    %120 = vector.shape_cast %119 : vector<1x16x128xf32> to vector<16x128xf32>
    %cst_110 = arith.constant dense<0.000000e+00> : vector<8x128xf32>
    %121 = tpu.matmul %118, %120, %cst_110 {dimension_numbers = #tpu.dot_dimension_numbers<[1], [0], [0], [1], [0, 0, 1, 1], [], []>} : vector<8x16xf32>, vector<16x128xf32>, vector<8x128xf32> -> vector<8x128xf32>
    %122 = arith.addf %117, %121 : vector<8x128xf32>
    %123 = vector.extract_strided_slice %76 {offsets = [72, 0], sizes = [8, 16], strides = [1, 1]} : vector<288x16xf32> to vector<8x16xf32>
    %c9 = arith.constant 9 : index
    %c0_111 = arith.constant 0 : index
    %c0_112 = arith.constant 0 : index
    %124 = vector.load %arg7[%c9, %c0_111, %c0_112] : memref<36x16x128xf32, #tpu.memory_space<vmem>>, vector<1x16x128xf32>
    %125 = vector.shape_cast %124 : vector<1x16x128xf32> to vector<16x128xf32>
    %cst_113 = arith.constant dense<0.000000e+00> : vector<8x128xf32>
    %126 = tpu.matmul %123, %125, %cst_113 {dimension_numbers = #tpu.dot_dimension_numbers<[1], [0], [0], [1], [0, 0, 1, 1], [], []>} : vector<8x16xf32>, vector<16x128xf32>, vector<8x128xf32> -> vector<8x128xf32>
    %127 = arith.addf %122, %126 : vector<8x128xf32>
    %128 = vector.extract_strided_slice %76 {offsets = [80, 0], sizes = [8, 16], strides = [1, 1]} : vector<288x16xf32> to vector<8x16xf32>
    %c10 = arith.constant 10 : index
    %c0_114 = arith.constant 0 : index
    %c0_115 = arith.constant 0 : index
    %129 = vector.load %arg7[%c10, %c0_114, %c0_115] : memref<36x16x128xf32, #tpu.memory_space<vmem>>, vector<1x16x128xf32>
    %130 = vector.shape_cast %129 : vector<1x16x128xf32> to vector<16x128xf32>
    %cst_116 = arith.constant dense<0.000000e+00> : vector<8x128xf32>
    %131 = tpu.matmul %128, %130, %cst_116 {dimension_numbers = #tpu.dot_dimension_numbers<[1], [0], [0], [1], [0, 0, 1, 1], [], []>} : vector<8x16xf32>, vector<16x128xf32>, vector<8x128xf32> -> vector<8x128xf32>
    %132 = arith.addf %127, %131 : vector<8x128xf32>
    %133 = vector.extract_strided_slice %76 {offsets = [88, 0], sizes = [8, 16], strides = [1, 1]} : vector<288x16xf32> to vector<8x16xf32>
    %c11 = arith.constant 11 : index
    %c0_117 = arith.constant 0 : index
    %c0_118 = arith.constant 0 : index
    %134 = vector.load %arg7[%c11, %c0_117, %c0_118] : memref<36x16x128xf32, #tpu.memory_space<vmem>>, vector<1x16x128xf32>
    %135 = vector.shape_cast %134 : vector<1x16x128xf32> to vector<16x128xf32>
    %cst_119 = arith.constant dense<0.000000e+00> : vector<8x128xf32>
    %136 = tpu.matmul %133, %135, %cst_119 {dimension_numbers = #tpu.dot_dimension_numbers<[1], [0], [0], [1], [0, 0, 1, 1], [], []>} : vector<8x16xf32>, vector<16x128xf32>, vector<8x128xf32> -> vector<8x128xf32>
    %137 = arith.addf %132, %136 : vector<8x128xf32>
    %138 = vector.extract_strided_slice %76 {offsets = [96, 0], sizes = [8, 16], strides = [1, 1]} : vector<288x16xf32> to vector<8x16xf32>
    %c12 = arith.constant 12 : index
    %c0_120 = arith.constant 0 : index
    %c0_121 = arith.constant 0 : index
    %139 = vector.load %arg7[%c12, %c0_120, %c0_121] : memref<36x16x128xf32, #tpu.memory_space<vmem>>, vector<1x16x128xf32>
    %140 = vector.shape_cast %139 : vector<1x16x128xf32> to vector<16x128xf32>
    %cst_122 = arith.constant dense<0.000000e+00> : vector<8x128xf32>
    %141 = tpu.matmul %138, %140, %cst_122 {dimension_numbers = #tpu.dot_dimension_numbers<[1], [0], [0], [1], [0, 0, 1, 1], [], []>} : vector<8x16xf32>, vector<16x128xf32>, vector<8x128xf32> -> vector<8x128xf32>
    %142 = arith.addf %137, %141 : vector<8x128xf32>
    %143 = vector.extract_strided_slice %76 {offsets = [104, 0], sizes = [8, 16], strides = [1, 1]} : vector<288x16xf32> to vector<8x16xf32>
    %c13 = arith.constant 13 : index
    %c0_123 = arith.constant 0 : index
    %c0_124 = arith.constant 0 : index
    %144 = vector.load %arg7[%c13, %c0_123, %c0_124] : memref<36x16x128xf32, #tpu.memory_space<vmem>>, vector<1x16x128xf32>
    %145 = vector.shape_cast %144 : vector<1x16x128xf32> to vector<16x128xf32>
    %cst_125 = arith.constant dense<0.000000e+00> : vector<8x128xf32>
    %146 = tpu.matmul %143, %145, %cst_125 {dimension_numbers = #tpu.dot_dimension_numbers<[1], [0], [0], [1], [0, 0, 1, 1], [], []>} : vector<8x16xf32>, vector<16x128xf32>, vector<8x128xf32> -> vector<8x128xf32>
    %147 = arith.addf %142, %146 : vector<8x128xf32>
    %148 = vector.extract_strided_slice %76 {offsets = [112, 0], sizes = [8, 16], strides = [1, 1]} : vector<288x16xf32> to vector<8x16xf32>
    %c14 = arith.constant 14 : index
    %c0_126 = arith.constant 0 : index
    %c0_127 = arith.constant 0 : index
    %149 = vector.load %arg7[%c14, %c0_126, %c0_127] : memref<36x16x128xf32, #tpu.memory_space<vmem>>, vector<1x16x128xf32>
    %150 = vector.shape_cast %149 : vector<1x16x128xf32> to vector<16x128xf32>
    %cst_128 = arith.constant dense<0.000000e+00> : vector<8x128xf32>
    %151 = tpu.matmul %148, %150, %cst_128 {dimension_numbers = #tpu.dot_dimension_numbers<[1], [0], [0], [1], [0, 0, 1, 1], [], []>} : vector<8x16xf32>, vector<16x128xf32>, vector<8x128xf32> -> vector<8x128xf32>
    %152 = arith.addf %147, %151 : vector<8x128xf32>
    %153 = vector.extract_strided_slice %76 {offsets = [120, 0], sizes = [8, 16], strides = [1, 1]} : vector<288x16xf32> to vector<8x16xf32>
    %c15 = arith.constant 15 : index
    %c0_129 = arith.constant 0 : index
    %c0_130 = arith.constant 0 : index
    %154 = vector.load %arg7[%c15, %c0_129, %c0_130] : memref<36x16x128xf32, #tpu.memory_space<vmem>>, vector<1x16x128xf32>
    %155 = vector.shape_cast %154 : vector<1x16x128xf32> to vector<16x128xf32>
    %cst_131 = arith.constant dense<0.000000e+00> : vector<8x128xf32>
    %156 = tpu.matmul %153, %155, %cst_131 {dimension_numbers = #tpu.dot_dimension_numbers<[1], [0], [0], [1], [0, 0, 1, 1], [], []>} : vector<8x16xf32>, vector<16x128xf32>, vector<8x128xf32> -> vector<8x128xf32>
    %157 = arith.addf %152, %156 : vector<8x128xf32>
    %158 = vector.extract_strided_slice %76 {offsets = [128, 0], sizes = [8, 16], strides = [1, 1]} : vector<288x16xf32> to vector<8x16xf32>
    %c16 = arith.constant 16 : index
    %c0_132 = arith.constant 0 : index
    %c0_133 = arith.constant 0 : index
    %159 = vector.load %arg7[%c16, %c0_132, %c0_133] : memref<36x16x128xf32, #tpu.memory_space<vmem>>, vector<1x16x128xf32>
    %160 = vector.shape_cast %159 : vector<1x16x128xf32> to vector<16x128xf32>
    %cst_134 = arith.constant dense<0.000000e+00> : vector<8x128xf32>
    %161 = tpu.matmul %158, %160, %cst_134 {dimension_numbers = #tpu.dot_dimension_numbers<[1], [0], [0], [1], [0, 0, 1, 1], [], []>} : vector<8x16xf32>, vector<16x128xf32>, vector<8x128xf32> -> vector<8x128xf32>
    %162 = arith.addf %157, %161 : vector<8x128xf32>
    %163 = vector.extract_strided_slice %76 {offsets = [136, 0], sizes = [8, 16], strides = [1, 1]} : vector<288x16xf32> to vector<8x16xf32>
    %c17 = arith.constant 17 : index
    %c0_135 = arith.constant 0 : index
    %c0_136 = arith.constant 0 : index
    %164 = vector.load %arg7[%c17, %c0_135, %c0_136] : memref<36x16x128xf32, #tpu.memory_space<vmem>>, vector<1x16x128xf32>
    %165 = vector.shape_cast %164 : vector<1x16x128xf32> to vector<16x128xf32>
    %cst_137 = arith.constant dense<0.000000e+00> : vector<8x128xf32>
    %166 = tpu.matmul %163, %165, %cst_137 {dimension_numbers = #tpu.dot_dimension_numbers<[1], [0], [0], [1], [0, 0, 1, 1], [], []>} : vector<8x16xf32>, vector<16x128xf32>, vector<8x128xf32> -> vector<8x128xf32>
    %167 = arith.addf %162, %166 : vector<8x128xf32>
    %168 = vector.extract_strided_slice %76 {offsets = [144, 0], sizes = [8, 16], strides = [1, 1]} : vector<288x16xf32> to vector<8x16xf32>
    %c18 = arith.constant 18 : index
    %c0_138 = arith.constant 0 : index
    %c0_139 = arith.constant 0 : index
    %169 = vector.load %arg7[%c18, %c0_138, %c0_139] : memref<36x16x128xf32, #tpu.memory_space<vmem>>, vector<1x16x128xf32>
    %170 = vector.shape_cast %169 : vector<1x16x128xf32> to vector<16x128xf32>
    %cst_140 = arith.constant dense<0.000000e+00> : vector<8x128xf32>
    %171 = tpu.matmul %168, %170, %cst_140 {dimension_numbers = #tpu.dot_dimension_numbers<[1], [0], [0], [1], [0, 0, 1, 1], [], []>} : vector<8x16xf32>, vector<16x128xf32>, vector<8x128xf32> -> vector<8x128xf32>
    %172 = arith.addf %167, %171 : vector<8x128xf32>
    %173 = vector.extract_strided_slice %76 {offsets = [152, 0], sizes = [8, 16], strides = [1, 1]} : vector<288x16xf32> to vector<8x16xf32>
    %c19 = arith.constant 19 : index
    %c0_141 = arith.constant 0 : index
    %c0_142 = arith.constant 0 : index
    %174 = vector.load %arg7[%c19, %c0_141, %c0_142] : memref<36x16x128xf32, #tpu.memory_space<vmem>>, vector<1x16x128xf32>
    %175 = vector.shape_cast %174 : vector<1x16x128xf32> to vector<16x128xf32>
    %cst_143 = arith.constant dense<0.000000e+00> : vector<8x128xf32>
    %176 = tpu.matmul %173, %175, %cst_143 {dimension_numbers = #tpu.dot_dimension_numbers<[1], [0], [0], [1], [0, 0, 1, 1], [], []>} : vector<8x16xf32>, vector<16x128xf32>, vector<8x128xf32> -> vector<8x128xf32>
    %177 = arith.addf %172, %176 : vector<8x128xf32>
    %178 = vector.extract_strided_slice %76 {offsets = [160, 0], sizes = [8, 16], strides = [1, 1]} : vector<288x16xf32> to vector<8x16xf32>
    %c20 = arith.constant 20 : index
    %c0_144 = arith.constant 0 : index
    %c0_145 = arith.constant 0 : index
    %179 = vector.load %arg7[%c20, %c0_144, %c0_145] : memref<36x16x128xf32, #tpu.memory_space<vmem>>, vector<1x16x128xf32>
    %180 = vector.shape_cast %179 : vector<1x16x128xf32> to vector<16x128xf32>
    %cst_146 = arith.constant dense<0.000000e+00> : vector<8x128xf32>
    %181 = tpu.matmul %178, %180, %cst_146 {dimension_numbers = #tpu.dot_dimension_numbers<[1], [0], [0], [1], [0, 0, 1, 1], [], []>} : vector<8x16xf32>, vector<16x128xf32>, vector<8x128xf32> -> vector<8x128xf32>
    %182 = arith.addf %177, %181 : vector<8x128xf32>
    %183 = vector.extract_strided_slice %76 {offsets = [168, 0], sizes = [8, 16], strides = [1, 1]} : vector<288x16xf32> to vector<8x16xf32>
    %c21 = arith.constant 21 : index
    %c0_147 = arith.constant 0 : index
    %c0_148 = arith.constant 0 : index
    %184 = vector.load %arg7[%c21, %c0_147, %c0_148] : memref<36x16x128xf32, #tpu.memory_space<vmem>>, vector<1x16x128xf32>
    %185 = vector.shape_cast %184 : vector<1x16x128xf32> to vector<16x128xf32>
    %cst_149 = arith.constant dense<0.000000e+00> : vector<8x128xf32>
    %186 = tpu.matmul %183, %185, %cst_149 {dimension_numbers = #tpu.dot_dimension_numbers<[1], [0], [0], [1], [0, 0, 1, 1], [], []>} : vector<8x16xf32>, vector<16x128xf32>, vector<8x128xf32> -> vector<8x128xf32>
    %187 = arith.addf %182, %186 : vector<8x128xf32>
    %188 = vector.extract_strided_slice %76 {offsets = [176, 0], sizes = [8, 16], strides = [1, 1]} : vector<288x16xf32> to vector<8x16xf32>
    %c22 = arith.constant 22 : index
    %c0_150 = arith.constant 0 : index
    %c0_151 = arith.constant 0 : index
    %189 = vector.load %arg7[%c22, %c0_150, %c0_151] : memref<36x16x128xf32, #tpu.memory_space<vmem>>, vector<1x16x128xf32>
    %190 = vector.shape_cast %189 : vector<1x16x128xf32> to vector<16x128xf32>
    %cst_152 = arith.constant dense<0.000000e+00> : vector<8x128xf32>
    %191 = tpu.matmul %188, %190, %cst_152 {dimension_numbers = #tpu.dot_dimension_numbers<[1], [0], [0], [1], [0, 0, 1, 1], [], []>} : vector<8x16xf32>, vector<16x128xf32>, vector<8x128xf32> -> vector<8x128xf32>
    %192 = arith.addf %187, %191 : vector<8x128xf32>
    %193 = vector.extract_strided_slice %76 {offsets = [184, 0], sizes = [8, 16], strides = [1, 1]} : vector<288x16xf32> to vector<8x16xf32>
    %c23 = arith.constant 23 : index
    %c0_153 = arith.constant 0 : index
    %c0_154 = arith.constant 0 : index
    %194 = vector.load %arg7[%c23, %c0_153, %c0_154] : memref<36x16x128xf32, #tpu.memory_space<vmem>>, vector<1x16x128xf32>
    %195 = vector.shape_cast %194 : vector<1x16x128xf32> to vector<16x128xf32>
    %cst_155 = arith.constant dense<0.000000e+00> : vector<8x128xf32>
    %196 = tpu.matmul %193, %195, %cst_155 {dimension_numbers = #tpu.dot_dimension_numbers<[1], [0], [0], [1], [0, 0, 1, 1], [], []>} : vector<8x16xf32>, vector<16x128xf32>, vector<8x128xf32> -> vector<8x128xf32>
    %197 = arith.addf %192, %196 : vector<8x128xf32>
    %198 = vector.extract_strided_slice %76 {offsets = [192, 0], sizes = [8, 16], strides = [1, 1]} : vector<288x16xf32> to vector<8x16xf32>
    %c24 = arith.constant 24 : index
    %c0_156 = arith.constant 0 : index
    %c0_157 = arith.constant 0 : index
    %199 = vector.load %arg7[%c24, %c0_156, %c0_157] : memref<36x16x128xf32, #tpu.memory_space<vmem>>, vector<1x16x128xf32>
    %200 = vector.shape_cast %199 : vector<1x16x128xf32> to vector<16x128xf32>
    %cst_158 = arith.constant dense<0.000000e+00> : vector<8x128xf32>
    %201 = tpu.matmul %198, %200, %cst_158 {dimension_numbers = #tpu.dot_dimension_numbers<[1], [0], [0], [1], [0, 0, 1, 1], [], []>} : vector<8x16xf32>, vector<16x128xf32>, vector<8x128xf32> -> vector<8x128xf32>
    %202 = arith.addf %197, %201 : vector<8x128xf32>
    %203 = vector.extract_strided_slice %76 {offsets = [200, 0], sizes = [8, 16], strides = [1, 1]} : vector<288x16xf32> to vector<8x16xf32>
    %c25 = arith.constant 25 : index
    %c0_159 = arith.constant 0 : index
    %c0_160 = arith.constant 0 : index
    %204 = vector.load %arg7[%c25, %c0_159, %c0_160] : memref<36x16x128xf32, #tpu.memory_space<vmem>>, vector<1x16x128xf32>
    %205 = vector.shape_cast %204 : vector<1x16x128xf32> to vector<16x128xf32>
    %cst_161 = arith.constant dense<0.000000e+00> : vector<8x128xf32>
    %206 = tpu.matmul %203, %205, %cst_161 {dimension_numbers = #tpu.dot_dimension_numbers<[1], [0], [0], [1], [0, 0, 1, 1], [], []>} : vector<8x16xf32>, vector<16x128xf32>, vector<8x128xf32> -> vector<8x128xf32>
    %207 = arith.addf %202, %206 : vector<8x128xf32>
    %208 = vector.extract_strided_slice %76 {offsets = [208, 0], sizes = [8, 16], strides = [1, 1]} : vector<288x16xf32> to vector<8x16xf32>
    %c26 = arith.constant 26 : index
    %c0_162 = arith.constant 0 : index
    %c0_163 = arith.constant 0 : index
    %209 = vector.load %arg7[%c26, %c0_162, %c0_163] : memref<36x16x128xf32, #tpu.memory_space<vmem>>, vector<1x16x128xf32>
    %210 = vector.shape_cast %209 : vector<1x16x128xf32> to vector<16x128xf32>
    %cst_164 = arith.constant dense<0.000000e+00> : vector<8x128xf32>
    %211 = tpu.matmul %208, %210, %cst_164 {dimension_numbers = #tpu.dot_dimension_numbers<[1], [0], [0], [1], [0, 0, 1, 1], [], []>} : vector<8x16xf32>, vector<16x128xf32>, vector<8x128xf32> -> vector<8x128xf32>
    %212 = arith.addf %207, %211 : vector<8x128xf32>
    %213 = vector.extract_strided_slice %76 {offsets = [216, 0], sizes = [8, 16], strides = [1, 1]} : vector<288x16xf32> to vector<8x16xf32>
    %c27 = arith.constant 27 : index
    %c0_165 = arith.constant 0 : index
    %c0_166 = arith.constant 0 : index
    %214 = vector.load %arg7[%c27, %c0_165, %c0_166] : memref<36x16x128xf32, #tpu.memory_space<vmem>>, vector<1x16x128xf32>
    %215 = vector.shape_cast %214 : vector<1x16x128xf32> to vector<16x128xf32>
    %cst_167 = arith.constant dense<0.000000e+00> : vector<8x128xf32>
    %216 = tpu.matmul %213, %215, %cst_167 {dimension_numbers = #tpu.dot_dimension_numbers<[1], [0], [0], [1], [0, 0, 1, 1], [], []>} : vector<8x16xf32>, vector<16x128xf32>, vector<8x128xf32> -> vector<8x128xf32>
    %217 = arith.addf %212, %216 : vector<8x128xf32>
    %218 = vector.extract_strided_slice %76 {offsets = [224, 0], sizes = [8, 16], strides = [1, 1]} : vector<288x16xf32> to vector<8x16xf32>
    %c28 = arith.constant 28 : index
    %c0_168 = arith.constant 0 : index
    %c0_169 = arith.constant 0 : index
    %219 = vector.load %arg7[%c28, %c0_168, %c0_169] : memref<36x16x128xf32, #tpu.memory_space<vmem>>, vector<1x16x128xf32>
    %220 = vector.shape_cast %219 : vector<1x16x128xf32> to vector<16x128xf32>
    %cst_170 = arith.constant dense<0.000000e+00> : vector<8x128xf32>
    %221 = tpu.matmul %218, %220, %cst_170 {dimension_numbers = #tpu.dot_dimension_numbers<[1], [0], [0], [1], [0, 0, 1, 1], [], []>} : vector<8x16xf32>, vector<16x128xf32>, vector<8x128xf32> -> vector<8x128xf32>
    %222 = arith.addf %217, %221 : vector<8x128xf32>
    %223 = vector.extract_strided_slice %76 {offsets = [232, 0], sizes = [8, 16], strides = [1, 1]} : vector<288x16xf32> to vector<8x16xf32>
    %c29 = arith.constant 29 : index
    %c0_171 = arith.constant 0 : index
    %c0_172 = arith.constant 0 : index
    %224 = vector.load %arg7[%c29, %c0_171, %c0_172] : memref<36x16x128xf32, #tpu.memory_space<vmem>>, vector<1x16x128xf32>
    %225 = vector.shape_cast %224 : vector<1x16x128xf32> to vector<16x128xf32>
    %cst_173 = arith.constant dense<0.000000e+00> : vector<8x128xf32>
    %226 = tpu.matmul %223, %225, %cst_173 {dimension_numbers = #tpu.dot_dimension_numbers<[1], [0], [0], [1], [0, 0, 1, 1], [], []>} : vector<8x16xf32>, vector<16x128xf32>, vector<8x128xf32> -> vector<8x128xf32>
    %227 = arith.addf %222, %226 : vector<8x128xf32>
    %228 = vector.extract_strided_slice %76 {offsets = [240, 0], sizes = [8, 16], strides = [1, 1]} : vector<288x16xf32> to vector<8x16xf32>
    %c30 = arith.constant 30 : index
    %c0_174 = arith.constant 0 : index
    %c0_175 = arith.constant 0 : index
    %229 = vector.load %arg7[%c30, %c0_174, %c0_175] : memref<36x16x128xf32, #tpu.memory_space<vmem>>, vector<1x16x128xf32>
    %230 = vector.shape_cast %229 : vector<1x16x128xf32> to vector<16x128xf32>
    %cst_176 = arith.constant dense<0.000000e+00> : vector<8x128xf32>
    %231 = tpu.matmul %228, %230, %cst_176 {dimension_numbers = #tpu.dot_dimension_numbers<[1], [0], [0], [1], [0, 0, 1, 1], [], []>} : vector<8x16xf32>, vector<16x128xf32>, vector<8x128xf32> -> vector<8x128xf32>
    %232 = arith.addf %227, %231 : vector<8x128xf32>
    %233 = vector.extract_strided_slice %76 {offsets = [248, 0], sizes = [8, 16], strides = [1, 1]} : vector<288x16xf32> to vector<8x16xf32>
    %c31 = arith.constant 31 : index
    %c0_177 = arith.constant 0 : index
    %c0_178 = arith.constant 0 : index
    %234 = vector.load %arg7[%c31, %c0_177, %c0_178] : memref<36x16x128xf32, #tpu.memory_space<vmem>>, vector<1x16x128xf32>
    %235 = vector.shape_cast %234 : vector<1x16x128xf32> to vector<16x128xf32>
    %cst_179 = arith.constant dense<0.000000e+00> : vector<8x128xf32>
    %236 = tpu.matmul %233, %235, %cst_179 {dimension_numbers = #tpu.dot_dimension_numbers<[1], [0], [0], [1], [0, 0, 1, 1], [], []>} : vector<8x16xf32>, vector<16x128xf32>, vector<8x128xf32> -> vector<8x128xf32>
    %237 = arith.addf %232, %236 : vector<8x128xf32>
    %238 = vector.extract_strided_slice %76 {offsets = [256, 0], sizes = [8, 16], strides = [1, 1]} : vector<288x16xf32> to vector<8x16xf32>
    %c32 = arith.constant 32 : index
    %c0_180 = arith.constant 0 : index
    %c0_181 = arith.constant 0 : index
    %239 = vector.load %arg7[%c32, %c0_180, %c0_181] : memref<36x16x128xf32, #tpu.memory_space<vmem>>, vector<1x16x128xf32>
    %240 = vector.shape_cast %239 : vector<1x16x128xf32> to vector<16x128xf32>
    %cst_182 = arith.constant dense<0.000000e+00> : vector<8x128xf32>
    %241 = tpu.matmul %238, %240, %cst_182 {dimension_numbers = #tpu.dot_dimension_numbers<[1], [0], [0], [1], [0, 0, 1, 1], [], []>} : vector<8x16xf32>, vector<16x128xf32>, vector<8x128xf32> -> vector<8x128xf32>
    %242 = arith.addf %237, %241 : vector<8x128xf32>
    %243 = vector.extract_strided_slice %76 {offsets = [264, 0], sizes = [8, 16], strides = [1, 1]} : vector<288x16xf32> to vector<8x16xf32>
    %c33 = arith.constant 33 : index
    %c0_183 = arith.constant 0 : index
    %c0_184 = arith.constant 0 : index
    %244 = vector.load %arg7[%c33, %c0_183, %c0_184] : memref<36x16x128xf32, #tpu.memory_space<vmem>>, vector<1x16x128xf32>
    %245 = vector.shape_cast %244 : vector<1x16x128xf32> to vector<16x128xf32>
    %cst_185 = arith.constant dense<0.000000e+00> : vector<8x128xf32>
    %246 = tpu.matmul %243, %245, %cst_185 {dimension_numbers = #tpu.dot_dimension_numbers<[1], [0], [0], [1], [0, 0, 1, 1], [], []>} : vector<8x16xf32>, vector<16x128xf32>, vector<8x128xf32> -> vector<8x128xf32>
    %247 = arith.addf %242, %246 : vector<8x128xf32>
    %248 = vector.extract_strided_slice %76 {offsets = [272, 0], sizes = [8, 16], strides = [1, 1]} : vector<288x16xf32> to vector<8x16xf32>
    %c34 = arith.constant 34 : index
    %c0_186 = arith.constant 0 : index
    %c0_187 = arith.constant 0 : index
    %249 = vector.load %arg7[%c34, %c0_186, %c0_187] : memref<36x16x128xf32, #tpu.memory_space<vmem>>, vector<1x16x128xf32>
    %250 = vector.shape_cast %249 : vector<1x16x128xf32> to vector<16x128xf32>
    %cst_188 = arith.constant dense<0.000000e+00> : vector<8x128xf32>
    %251 = tpu.matmul %248, %250, %cst_188 {dimension_numbers = #tpu.dot_dimension_numbers<[1], [0], [0], [1], [0, 0, 1, 1], [], []>} : vector<8x16xf32>, vector<16x128xf32>, vector<8x128xf32> -> vector<8x128xf32>
    %252 = arith.addf %247, %251 : vector<8x128xf32>
    %253 = vector.extract_strided_slice %76 {offsets = [280, 0], sizes = [8, 16], strides = [1, 1]} : vector<288x16xf32> to vector<8x16xf32>
    %c35 = arith.constant 35 : index
    %c0_189 = arith.constant 0 : index
    %c0_190 = arith.constant 0 : index
    %254 = vector.load %arg7[%c35, %c0_189, %c0_190] : memref<36x16x128xf32, #tpu.memory_space<vmem>>, vector<1x16x128xf32>
    %255 = vector.shape_cast %254 : vector<1x16x128xf32> to vector<16x128xf32>
    %cst_191 = arith.constant dense<0.000000e+00> : vector<8x128xf32>
    %256 = tpu.matmul %253, %255, %cst_191 {dimension_numbers = #tpu.dot_dimension_numbers<[1], [0], [0], [1], [0, 0, 1, 1], [], []>} : vector<8x16xf32>, vector<16x128xf32>, vector<8x128xf32> -> vector<8x128xf32>
    %257 = arith.addf %252, %256 : vector<8x128xf32>
    %c0_192 = arith.constant 0 : index
    %c0_193 = arith.constant 0 : index
    %258 = vector.load %arg8[%c0_192, %c0_193] : memref<1x128xf32, #tpu.memory_space<vmem>>, vector<1x128xf32>
    %259 = vector.broadcast %258 : vector<1x128xf32> to vector<8x128xf32>
    %260 = arith.addf %257, %259 : vector<8x128xf32>
    %cst_194 = arith.constant 0.000000e+00 : f32
    %261 = vector.broadcast %cst_194 : f32 to vector<8x128xf32>
    %262 = arith.maximumf %260, %261 : vector<8x128xf32>
    %c0_195 = arith.constant 0 : index
    %c0_196 = arith.constant 0 : index
    %263 = vector.load %arg9[%c0_195, %c0_196] : memref<128x128xf32, #tpu.memory_space<vmem>>, vector<128x128xf32>
    %cst_197 = arith.constant dense<0.000000e+00> : vector<8x128xf32>
    %264 = tpu.matmul %262, %263, %cst_197 {dimension_numbers = #tpu.dot_dimension_numbers<[1], [0], [0], [1], [0, 0, 1, 1], [], []>} : vector<8x128xf32>, vector<128x128xf32>, vector<8x128xf32> -> vector<8x128xf32>
    %c0_198 = arith.constant 0 : index
    %c0_199 = arith.constant 0 : index
    %265 = vector.load %arg10[%c0_198, %c0_199] : memref<1x128xf32, #tpu.memory_space<vmem>>, vector<1x128xf32>
    %266 = vector.broadcast %265 : vector<1x128xf32> to vector<8x128xf32>
    %267 = arith.addf %264, %266 : vector<8x128xf32>
    %cst_200 = arith.constant 0.000000e+00 : f32
    %268 = vector.broadcast %cst_200 : f32 to vector<8x128xf32>
    %269 = arith.maximumf %267, %268 : vector<8x128xf32>
    %c0_201 = arith.constant 0 : index
    %c0_202 = arith.constant 0 : index
    %270 = vector.load %arg11[%c0_201, %c0_202] : memref<128x128xf32, #tpu.memory_space<vmem>>, vector<128x128xf32>
    %cst_203 = arith.constant dense<0.000000e+00> : vector<8x128xf32>
    %271 = tpu.matmul %269, %270, %cst_203 {dimension_numbers = #tpu.dot_dimension_numbers<[1], [0], [0], [1], [0, 0, 1, 1], [], []>} : vector<8x128xf32>, vector<128x128xf32>, vector<8x128xf32> -> vector<8x128xf32>
    %c0_204 = arith.constant 0 : index
    %c0_205 = arith.constant 0 : index
    %272 = vector.load %arg12[%c0_204, %c0_205] : memref<1x128xf32, #tpu.memory_space<vmem>>, vector<1x128xf32>
    %273 = vector.broadcast %272 : vector<1x128xf32> to vector<8x128xf32>
    %274 = arith.addf %271, %273 : vector<8x128xf32>
    %c0_206 = arith.constant 0 : index
    %c0_207 = arith.constant 0 : index
    %275 = vector.load %arg13[%c0_206, %c0_207] : memref<8x128xf32, #tpu.memory_space<vmem>>, vector<8x128xf32>
    tpu.vector_store %arg13[%c0_206, %c0_207], %274 {strides = array<i32>} : memref<8x128xf32, #tpu.memory_space<vmem>>, vector<8x128xf32>,
    return
  }
  func.func @transform_0(%arg0: i32) -> (i32, i32) {
    %c0_i32 = arith.constant 0 : i32
    %c0_i32_0 = arith.constant 0 : i32
    %c0_i32_1 = arith.constant 0 : i32
    return %c0_i32, %c0_i32_0 : i32, i32
  }
  func.func @transform_1(%arg0: i32) -> (i32, i32) {
    %c0_i32 = arith.constant 0 : i32
    %c0_i32_0 = arith.constant 0 : i32
    %c0_i32_1 = arith.constant 0 : i32
    return %c0_i32, %c0_i32_0 : i32, i32
  }
  func.func @transform_2(%arg0: i32) -> (i32, i32) {
    %c0_i32 = arith.constant 0 : i32
    %c0_i32_0 = arith.constant 0 : i32
    %c0_i32_1 = arith.constant 0 : i32
    return %c0_i32, %c0_i32_0 : i32, i32
  }
  func.func @transform_3(%arg0: i32) -> (i32, i32, i32) {
    %c0_i32 = arith.constant 0 : i32
    %c0_i32_0 = arith.constant 0 : i32
    %c0_i32_1 = arith.constant 0 : i32
    %c0_i32_2 = arith.constant 0 : i32
    return %c0_i32, %c0_i32_0, %c0_i32_1 : i32, i32, i32
  }
  func.func @transform_4(%arg0: i32) -> (i32, i32, i32) {
    %c0_i32 = arith.constant 0 : i32
    %c0_i32_0 = arith.constant 0 : i32
    %c0_i32_1 = arith.constant 0 : i32
    %c0_i32_2 = arith.constant 0 : i32
    return %c0_i32, %c0_i32_0, %c0_i32_1 : i32, i32, i32
  }
  func.func @transform_5(%arg0: i32) -> (i32, i32) {
    %c0_i32 = arith.constant 0 : i32
    %c0_i32_0 = arith.constant 0 : i32
    %c0_i32_1 = arith.constant 0 : i32
    return %c0_i32, %c0_i32_0 : i32, i32
  }
  func.func @transform_6(%arg0: i32) -> (i32, i32, i32) {
    %c0_i32 = arith.constant 0 : i32
    %c0_i32_0 = arith.constant 0 : i32
    %c0_i32_1 = arith.constant 0 : i32
    %c0_i32_2 = arith.constant 0 : i32
    return %c0_i32, %c0_i32_0, %c0_i32_1 : i32, i32, i32
  }
  func.func @transform_7(%arg0: i32) -> (i32, i32) {
    %c0_i32 = arith.constant 0 : i32
    %c0_i32_0 = arith.constant 0 : i32
    %c0_i32_1 = arith.constant 0 : i32
    return %c0_i32, %c0_i32_0 : i32, i32
  }
  func.func @transform_8(%arg0: i32) -> (i32, i32) {
    %c0_i32 = arith.constant 0 : i32
    %c0_i32_0 = arith.constant 0 : i32
    %c0_i32_1 = arith.constant 0 : i32
    return %c0_i32, %c0_i32_0 : i32, i32
  }
  func.func @transform_9(%arg0: i32) -> (i32, i32) {
    %c0_i32 = arith.constant 0 : i32
    %c0_i32_0 = arith.constant 0 : i32
    %c0_i32_1 = arith.constant 0 : i32
    return %c0_i32, %c0_i32_0 : i32, i32
  }
  func.func @transform_10(%arg0: i32) -> (i32, i32) {
    %c0_i32 = arith.constant 0 : i32
    %c0_i32_0 = arith.constant 0 : i32
    %c0_i32_1 = arith.constant 0 : i32
    return %c0_i32, %c0_i32_0 : i32, i32
  }
  func.func @transform_11(%arg0: i32) -> (i32, i32) {
    %c0_i32 = arith.constant 0 : i32
    %c0_i32_0 = arith.constant 0 : i32
    %c0_i32_1 = arith.constant 0 : i32
    return %c0_i32, %c0_i32_0 : i32, i32
  }
  func.func @transform_12(%arg0: i32) -> (i32, i32) {
    %c0_i32 = arith.constant 0 : i32
    %c0_i32_0 = arith.constant 0 : i32
    %c0_i32_1 = arith.constant 0 : i32
    return %c0_i32, %c0_i32_0 : i32, i32
  }
}

</mosaic_0001>

<llo_original>
// kernel: hash_model_forward.1
$region0: #{hash_model_forward.1}
  #allocation0 [shape = 'u32[]', space=smem, size = 0x4, offset = 0x4, fixed_abs, tag = 'smem constant byte address 0x4 - core index']
  #allocation1 [shape = 'u32[144,128]{1,0:T(1,128)}', space=vmem, size = 0x12000, scoped, tag = 'internal scratch']
  %s0 = inlined_call_operand.vmem [shape: f32[288,32], index: 0, kind: input, shape index: {}]
  %s1 = inlined_call_operand.vmem [shape: f32[32,8], index: 1, kind: input, shape index: {}]
  %s2 = inlined_call_operand.vmem [shape: f32[1,8], index: 2, kind: input, shape index: {}]
  %s3 = inlined_call_operand.vmem [shape: f32[9,288,288], index: 3, kind: input, shape index: {}]
  %s4 = inlined_call_operand.vmem [shape: f32[9,8,16], index: 4, kind: input, shape index: {}]
  %s5 = inlined_call_operand.vmem [shape: f32[1,16], index: 5, kind: input, shape index: {}]
  %s6 = inlined_call_operand.vmem [shape: f32[36,16,128], index: 6, kind: input, shape index: {}]
  %s7 = inlined_call_operand.vmem [shape: f32[1,128], index: 7, kind: input, shape index: {}]
  %s8 = inlined_call_operand.vmem [shape: f32[128,128], index: 8, kind: input, shape index: {}]
  %s9 = inlined_call_operand.vmem [shape: f32[1,128], index: 9, kind: input, shape index: {}]
  %s10 = inlined_call_operand.vmem [shape: f32[128,128], index: 10, kind: input, shape index: {}]
  %s11 = inlined_call_operand.vmem [shape: f32[1,128], index: 11, kind: input, shape index: {}]
  %s12 = inlined_call_operand.vmem [shape: f32[8,128], index: 12, kind: output, shape index: {}]
  %s13 = sld [smem:[#allocation0]]
  $region58: #{hash_model_forward.1} parent=0
    _
  %s15 = ssub.s32 1, %s13
  %s16 = scalar_select 0, %s15, %s13
  // Predicated region
  $region2: #{hash_model_forward.1} parent=0 // pred_check
    _
  $region3: #{hash_model_forward.1} parent=0 // pred_check_branch
    %18 = sbr.rel (0) target = $region5
  $region4: #{hash_model_forward.1} parent=0 // pred_region
    _
  $region5: #{hash_model_forward.1} parent=0 // pred_fallthru
    _
  // Predicated region
  $region6: #{hash_model_forward.1} parent=0 // pred_check
    _
  $region7: #{hash_model_forward.1} parent=0 // pred_check_branch
    %20 = sbr.rel (0) target = $region9
  $region8: #{hash_model_forward.1} parent=0 // pred_region
    _
  $region9: #{hash_model_forward.1} parent=0 // pred_fallthru
    _
  // Predicated region
  $region10: #{hash_model_forward.1} parent=0 // pred_check
    _
  $region11: #{hash_model_forward.1} parent=0 // pred_check_branch
    %22 = sbr.rel (0) target = $region13
  $region12: #{hash_model_forward.1} parent=0 // pred_region
    _
  $region13: #{hash_model_forward.1} parent=0 // pred_fallthru
    _
  // Predicated region
  $region14: #{hash_model_forward.1} parent=0 // pred_check
    _
  $region15: #{hash_model_forward.1} parent=0 // pred_check_branch
    %24 = sbr.rel (0) target = $region17
  $region16: #{hash_model_forward.1} parent=0 // pred_region
    _
  $region17: #{hash_model_forward.1} parent=0 // pred_fallthru
    _
  // Predicated region
  $region18: #{hash_model_forward.1} parent=0 // pred_check
    _
  $region19: #{hash_model_forward.1} parent=0 // pred_check_branch
    %26 = sbr.rel (0) target = $region21
  $region20: #{hash_model_forward.1} parent=0 // pred_region
    _
  $region21: #{hash_model_forward.1} parent=0 // pred_fallthru
    _
  // Predicated region
  $region22: #{hash_model_forward.1} parent=0 // pred_check
    _
  $region23: #{hash_model_forward.1} parent=0 // pred_check_branch
    %28 = sbr.rel (0) target = $region25
  $region24: #{hash_model_forward.1} parent=0 // pred_region
    _
  $region25: #{hash_model_forward.1} parent=0 // pred_fallthru
    _
  // Predicated region
  $region26: #{hash_model_forward.1} parent=0 // pred_check
    _
  $region27: #{hash_model_forward.1} parent=0 // pred_check_branch
    %30 = sbr.rel (0) target = $region29
  $region28: #{hash_model_forward.1} parent=0 // pred_region
    _
  $region29: #{hash_model_forward.1} parent=0 // pred_fallthru
    _
  // Predicated region
  $region30: #{hash_model_forward.1} parent=0 // pred_check
    _
  $region31: #{hash_model_forward.1} parent=0 // pred_check_branch
    %32 = sbr.rel (0) target = $region33
  $region32: #{hash_model_forward.1} parent=0 // pred_region
    _
  $region33: #{hash_model_forward.1} parent=0 // pred_fallthru
    _
  // Predicated region
  $region34: #{hash_model_forward.1} parent=0 // pred_check
    _
  $region35: #{hash_model_forward.1} parent=0 // pred_check_branch
    %34 = sbr.rel (0) target = $region37
  $region36: #{hash_model_forward.1} parent=0 // pred_region
    _
  $region37: #{hash_model_forward.1} parent=0 // pred_fallthru
    _
  // Predicated region
  $region38: #{hash_model_forward.1} parent=0 // pred_check
    _
  $region39: #{hash_model_forward.1} parent=0 // pred_check_branch
    %36 = sbr.rel (0) target = $region41
  $region40: #{hash_model_forward.1} parent=0 // pred_region
    _
  $region41: #{hash_model_forward.1} parent=0 // pred_fallthru
    _
  // Predicated region
  $region42: #{hash_model_forward.1} parent=0 // pred_check
    _
  $region43: #{hash_model_forward.1} parent=0 // pred_check_branch
    %38 = sbr.rel (0) target = $region45
  $region44: #{hash_model_forward.1} parent=0 // pred_region
    _
  $region45: #{hash_model_forward.1} parent=0 // pred_fallthru
    _
  // Predicated region
  $region46: #{hash_model_forward.1} parent=0 // pred_check
    _
  $region47: #{hash_model_forward.1} parent=0 // pred_check_branch
    %40 = sbr.rel (0) target = $region49
  $region48: #{hash_model_forward.1} parent=0 // pred_region
    _
  $region49: #{hash_model_forward.1} parent=0 // pred_fallthru
    _
  %v41 = vld [vmem:[%s0] sm:$0xff]
  %v42 = vld [vmem:[%s0 + $0x8] sm:$0xff]
  %v43 = vld [vmem:[%s0 + $0x10] sm:$0xff]
  %v44 = vld [vmem:[%s0 + $0x18] sm:$0xff]
  %v45 = vld [vmem:[%s0 + $0x20] sm:$0xff]
  %v46 = vld [vmem:[%s0 + $0x28] sm:$0xff]
  %v47 = vld [vmem:[%s0 + $0x30] sm:$0xff]
  %v48 = vld [vmem:[%s0 + $0x38] sm:$0xff]
  %v49 = vld [vmem:[%s0 + $0x40] sm:$0xff]
  %v50 = vld [vmem:[%s0 + $0x48] sm:$0xff]
  %v51 = vld [vmem:[%s0 + $0x50] sm:$0xff]
  %v52 = vld [vmem:[%s0 + $0x58] sm:$0xff]
  %v53 = vld [vmem:[%s0 + $0x60] sm:$0xff]
  %v54 = vld [vmem:[%s0 + $0x68] sm:$0xff]
  %v55 = vld [vmem:[%s0 + $0x70] sm:$0xff]
  %v56 = vld [vmem:[%s0 + $0x78] sm:$0xff]
  %v57 = vld [vmem:[%s0 + $0x80] sm:$0xff]
  %v58 = vld [vmem:[%s0 + $0x88] sm:$0xff]
  %v59 = vld [vmem:[%s0 + $0x90] sm:$0xff]
  %v60 = vld [vmem:[%s0 + $0x98] sm:$0xff]
  %v61 = vld [vmem:[%s0 + $0xa0] sm:$0xff]
  %v62 = vld [vmem:[%s0 + $0xa8] sm:$0xff]
  %v63 = vld [vmem:[%s0 + $0xb0] sm:$0xff]
  %v64 = vld [vmem:[%s0 + $0xb8] sm:$0xff]
  %v65 = vld [vmem:[%s0 + $0xc0] sm:$0xff]
  %v66 = vld [vmem:[%s0 + $0xc8] sm:$0xff]
  %v67 = vld [vmem:[%s0 + $0xd0] sm:$0xff]
  %v68 = vld [vmem:[%s0 + $0xd8] sm:$0xff]
  %v69 = vld [vmem:[%s0 + $0xe0] sm:$0xff]
  %v70 = vld [vmem:[%s0 + $0xe8] sm:$0xff]
  %v71 = vld [vmem:[%s0 + $0xf0] sm:$0xff]
  %v72 = vld [vmem:[%s0 + $0xf8] sm:$0xff]
  %v73 = vld [vmem:[%s0 + $0x100] sm:$0xff]
  %v74 = vld [vmem:[%s0 + $0x108] sm:$0xff]
  %v75 = vld [vmem:[%s0 + $0x110] sm:$0xff]
  %v76 = vld [vmem:[%s0 + $0x118] sm:$0xff]
  %v77 = vld [vmem:[%s1] sm:$0xff]
  %v78 = vld [vmem:[%s1 + $0x8] sm:$0xff]
  %v79 = vld [vmem:[%s1 + $0x10] sm:$0xff]
  %v80 = vld [vmem:[%s1 + $0x18] sm:$0xff]
  %v81 = vld [vmem:[%s2] sm:$0x1]
  %v83 = vlaneseq
  %v84 = vshrl.u32 %v83, 7
  %v85 = vsub.s32 0, %v84
  %v86 = vrot.slane %v81, %v85
  %vm88 = vcmask 261120
  %v90 = vsel %vm88, %v41, 0
  %v93 = vsel %vm88, %v42, 0
  %v96 = vsel %vm88, %v43, 0
  %v99 = vsel %vm88, %v44, 0
  %v102 = vsel %vm88, %v45, 0
  %v105 = vsel %vm88, %v46, 0
  %v108 = vsel %vm88, %v47, 0
  %v111 = vsel %vm88, %v48, 0
  %v114 = vsel %vm88, %v49, 0
  %v117 = vsel %vm88, %v50, 0
  %v120 = vsel %vm88, %v51, 0
  %v123 = vsel %vm88, %v52, 0
  %v126 = vsel %vm88, %v53, 0
  %v129 = vsel %vm88, %v54, 0
  %v132 = vsel %vm88, %v55, 0
  %v135 = vsel %vm88, %v56, 0
  %v138 = vsel %vm88, %v57, 0
  %v141 = vsel %vm88, %v58, 0
  %v144 = vsel %vm88, %v59, 0
  %v147 = vsel %vm88, %v60, 0
  %v150 = vsel %vm88, %v61, 0
  %v153 = vsel %vm88, %v62, 0
  %v156 = vsel %vm88, %v63, 0
  %v159 = vsel %vm88, %v64, 0
  %v162 = vsel %vm88, %v65, 0
  %v165 = vsel %vm88, %v66, 0
  %v168 = vsel %vm88, %v67, 0
  %v171 = vsel %vm88, %v68, 0
  %v174 = vsel %vm88, %v69, 0
  %v177 = vsel %vm88, %v70, 0
  %v180 = vsel %vm88, %v71, 0
  %v183 = vsel %vm88, %v72, 0
  %v186 = vsel %vm88, %v73, 0
  %v189 = vsel %vm88, %v74, 0
  %v192 = vsel %vm88, %v75, 0
  %v195 = vsel %vm88, %v76, 0
  %197 = vmatprep.subr.mxu0 0.0
  %198 = vmatpush1.msra.mxu0 0.0
  %199 = vmatprep.subr.mxu0 0.0
  %200 = vmatpush1.msra.mxu0 0.0
  %201 = vmatprep.subr.mxu0 0.0
  %202 = vmatpush1.msra.mxu0 0.0
  %203 = vmatprep.subr.mxu0 0.0
  %204 = vmatpush1.msra.mxu0 0.0
  %205 = vmatprep.subr.mxu0 0.0
  %206 = vmatpush1.msra.mxu0 0.0
  %207 = vmatprep.subr.mxu0 0.0
  %208 = vmatpush1.msra.mxu0 0.0
  %209 = vmatprep.subr.mxu0 0.0
  %210 = vmatpush1.msra.mxu0 0.0
  %211 = vmatprep.subr.mxu0 0.0
  %212 = vmatpush1.msra.mxu0 0.0
  %213 = vmatprep.subr.mxu0 0.0
  %214 = vmatpush1.msra.mxu0 0.0
  %215 = vmatprep.subr.mxu0 0.0
  %216 = vmatpush1.msra.mxu0 0.0
  %217 = vmatprep.subr.mxu0 0.0
  %218 = vmatpush1.msra.mxu0 0.0
  %219 = vmatprep.subr.mxu0 0.0
  %220 = vmatpush1.msra.mxu0 0.0
  %221 = vmatprep.subr.mxu0 0.0
  %222 = vmatpush1.msra.mxu0 %v80
  %223 = vmatprep.subr.mxu0 0.0
  %224 = vmatpush1.msra.mxu0 %v79
  %225 = vmatprep.subr.mxu0 0.0
  %226 = vmatpush1.msra.mxu0 %v78
  %227 = vmatprep.subr.mxu0 0.0
  %228 = vmatpush1.msra.mxu0 %v77
  %229 = vmatprep.subr.mxu0 0.0
  %230 = vmatpush2.msra.mxu0 0.0
  %231 = vmatprep.subr.mxu0 0.0
  %232 = vmatpush2.msra.mxu0 0.0
  %233 = vmatprep.subr.mxu0 0.0
  %234 = vmatpush2.msra.mxu0 0.0
  %235 = vmatprep.subr.mxu0 0.0
  %236 = vmatpush2.msra.mxu0 0.0
  %237 = vmatprep.subr.mxu0 0.0
  %238 = vmatpush2.msra.mxu0 0.0
  %239 = vmatprep.subr.mxu0 0.0
  %240 = vmatpush2.msra.mxu0 0.0
  %241 = vmatprep.subr.mxu0 0.0
  %242 = vmatpush2.msra.mxu0 0.0
  %243 = vmatprep.subr.mxu0 0.0
  %244 = vmatpush2.msra.mxu0 0.0
  %245 = vmatprep.subr.mxu0 0.0
  %246 = vmatpush2.msra.mxu0 0.0
  %247 = vmatprep.subr.mxu0 0.0
  %248 = vmatpush2.msra.mxu0 0.0
  %249 = vmatprep.subr.mxu0 0.0
  %250 = vmatpush2.msra.mxu0 0.0
  %251 = vmatprep.subr.mxu0 0.0
  %252 = vmatpush2.msra.mxu0 0.0
  %253 = vmatprep.subr.mxu0 0.0
  %254 = vmatpush2.msra.mxu0 0.0
  %255 = vmatprep.subr.mxu0 0.0
  %256 = vmatpush2.msra.mxu0 0.0
  %257 = vmatprep.subr.mxu0 0.0
  %258 = vmatpush2.msra.mxu0 0.0
  %259 = vmatprep.subr.mxu0 0.0
  %260 = vmatpush2.msra.mxu0 0.0
  %261 = vmatprep.mubr.f32.mxu0 0.0
  %262 = vmatmul.mubr.f32.gmra.mxu0 %v90
  %v263 = vpop.f32.mrf.mxu0
  %v264 = vadd.f32 %v86, %v263
  %v265 = vpop.f32.mrf.mxu0
  %266 = vmatprep.mubr.f32.mxu0 0.0
  %267 = vmatmul.mubr.f32.gmra.mxu0 %v93
  %v268 = vpop.f32.mrf.mxu0
  %v269 = vadd.f32 %v86, %v268
  %v270 = vpop.f32.mrf.mxu0
  %271 = vmatprep.mubr.f32.mxu0 0.0
  %272 = vmatmul.mubr.f32.gmra.mxu0 %v96
  %v273 = vpop.f32.mrf.mxu0
  %v274 = vadd.f32 %v86, %v273
  %v275 = vpop.f32.mrf.mxu0
  %276 = vmatprep.mubr.f32.mxu0 0.0
  %277 = vmatmul.mubr.f32.gmra.mxu0 %v99
  %v278 = vpop.f32.mrf.mxu0
  %v279 = vadd.f32 %v86, %v278
  %v280 = vpop.f32.mrf.mxu0
  %281 = vmatprep.mubr.f32.mxu0 0.0
  %282 = vmatmul.mubr.f32.gmra.mxu0 %v102
  %v283 = vpop.f32.mrf.mxu0
  %v284 = vadd.f32 %v86, %v283
  %v285 = vpop.f32.mrf.mxu0
  %286 = vmatprep.mubr.f32.mxu0 0.0
  %287 = vmatmul.mubr.f32.gmra.mxu0 %v105
  %v288 = vpop.f32.mrf.mxu0
  %v289 = vadd.f32 %v86, %v288
  %v290 = vpop.f32.mrf.mxu0
  %291 = vmatprep.mubr.f32.mxu0 0.0
  %292 = vmatmul.mubr.f32.gmra.mxu0 %v108
  %v293 = vpop.f32.mrf.mxu0
  %v294 = vadd.f32 %v86, %v293
  %v295 = vpop.f32.mrf.mxu0
  %296 = vmatprep.mubr.f32.mxu0 0.0
  %297 = vmatmul.mubr.f32.gmra.mxu0 %v111
  %v298 = vpop.f32.mrf.mxu0
  %v299 = vadd.f32 %v86, %v298
  %v300 = vpop.f32.mrf.mxu0
  %301 = vmatprep.mubr.f32.mxu0 0.0
  %302 = vmatmul.mubr.f32.gmra.mxu0 %v114
  %v303 = vpop.f32.mrf.mxu0
  %v304 = vadd.f32 %v86, %v303
  %v305 = vpop.f32.mrf.mxu0
  %306 = vmatprep.mubr.f32.mxu0 0.0
  %307 = vmatmul.mubr.f32.gmra.mxu0 %v117
  %v308 = vpop.f32.mrf.mxu0
  %v309 = vadd.f32 %v86, %v308
  %v310 = vpop.f32.mrf.mxu0
  %311 = vmatprep.mubr.f32.mxu0 0.0
  %312 = vmatmul.mubr.f32.gmra.mxu0 %v120
  %v313 = vpop.f32.mrf.mxu0
  %v314 = vadd.f32 %v86, %v313
  %v315 = vpop.f32.mrf.mxu0
  %316 = vmatprep.mubr.f32.mxu0 0.0
  %317 = vmatmul.mubr.f32.gmra.mxu0 %v123
  %v318 = vpop.f32.mrf.mxu0
  %v319 = vadd.f32 %v86, %v318
  %v320 = vpop.f32.mrf.mxu0
  %321 = vmatprep.mubr.f32.mxu0 0.0
  %322 = vmatmul.mubr.f32.gmra.mxu0 %v126
  %v323 = vpop.f32.mrf.mxu0
  %v324 = vadd.f32 %v86, %v323
  %v325 = vpop.f32.mrf.mxu0
  %326 = vmatprep.mubr.f32.mxu0 0.0
  %327 = vmatmul.mubr.f32.gmra.mxu0 %v129
  %v328 = vpop.f32.mrf.mxu0
  %v329 = vadd.f32 %v86, %v328
  %v330 = vpop.f32.mrf.mxu0
  %331 = vmatprep.mubr.f32.mxu0 0.0
  %332 = vmatmul.mubr.f32.gmra.mxu0 %v132
  %v333 = vpop.f32.mrf.mxu0
  %v334 = vadd.f32 %v86, %v333
  %v335 = vpop.f32.mrf.mxu0
  %336 = vmatprep.mubr.f32.mxu0 0.0
  %337 = vmatmul.mubr.f32.gmra.mxu0 %v135
  %v338 = vpop.f32.mrf.mxu0
  %v339 = vadd.f32 %v86, %v338
  %v340 = vpop.f32.mrf.mxu0
  %341 = vmatprep.mubr.f32.mxu0 0.0
  %342 = vmatmul.mubr.f32.gmra.mxu0 %v138
  %v343 = vpop.f32.mrf.mxu0
  %v344 = vadd.f32 %v86, %v343
  %v345 = vpop.f32.mrf.mxu0
  %346 = vmatprep.mubr.f32.mxu0 0.0
  %347 = vmatmul.mubr.f32.gmra.mxu0 %v141
  %v348 = vpop.f32.mrf.mxu0
  %v349 = vadd.f32 %v86, %v348
  %v350 = vpop.f32.mrf.mxu0
  %351 = vmatprep.mubr.f32.mxu0 0.0
  %352 = vmatmul.mubr.f32.gmra.mxu0 %v144
  %v353 = vpop.f32.mrf.mxu0
  %v354 = vadd.f32 %v86, %v353
  %v355 = vpop.f32.mrf.mxu0
  %356 = vmatprep.mubr.f32.mxu0 0.0
  %357 = vmatmul.mubr.f32.gmra.mxu0 %v147
  %v358 = vpop.f32.mrf.mxu0
  %v359 = vadd.f32 %v86, %v358
  %v360 = vpop.f32.mrf.mxu0
  %361 = vmatprep.mubr.f32.mxu0 0.0
  %362 = vmatmul.mubr.f32.gmra.mxu0 %v150
  %v363 = vpop.f32.mrf.mxu0
  %v364 = vadd.f32 %v86, %v363
  %v365 = vpop.f32.mrf.mxu0
  %366 = vmatprep.mubr.f32.mxu0 0.0
  %367 = vmatmul.mubr.f32.gmra.mxu0 %v153
  %v368 = vpop.f32.mrf.mxu0
  %v369 = vadd.f32 %v86, %v368
  %v370 = vpop.f32.mrf.mxu0
  %371 = vmatprep.mubr.f32.mxu0 0.0
  %372 = vmatmul.mubr.f32.gmra.mxu0 %v156
  %v373 = vpop.f32.mrf.mxu0
  %v374 = vadd.f32 %v86, %v373
  %v375 = vpop.f32.mrf.mxu0
  %376 = vmatprep.mubr.f32.mxu0 0.0
  %377 = vmatmul.mubr.f32.gmra.mxu0 %v159
  %v378 = vpop.f32.mrf.mxu0
  %v379 = vadd.f32 %v86, %v378
  %v380 = vpop.f32.mrf.mxu0
  %381 = vmatprep.mubr.f32.mxu0 0.0
  %382 = vmatmul.mubr.f32.gmra.mxu0 %v162
  %v383 = vpop.f32.mrf.mxu0
  %v384 = vadd.f32 %v86, %v383
  %v385 = vpop.f32.mrf.mxu0
  %386 = vmatprep.mubr.f32.mxu0 0.0
  %387 = vmatmul.mubr.f32.gmra.mxu0 %v165
  %v388 = vpop.f32.mrf.mxu0
  %v389 = vadd.f32 %v86, %v388
  %v390 = vpop.f32.mrf.mxu0
  %391 = vmatprep.mubr.f32.mxu0 0.0
  %392 = vmatmul.mubr.f32.gmra.mxu0 %v168
  %v393 = vpop.f32.mrf.mxu0
  %v394 = vadd.f32 %v86, %v393
  %v395 = vpop.f32.mrf.mxu0
  %396 = vmatprep.mubr.f32.mxu0 0.0
  %397 = vmatmul.mubr.f32.gmra.mxu0 %v171
  %v398 = vpop.f32.mrf.mxu0
  %v399 = vadd.f32 %v86, %v398
  %v400 = vpop.f32.mrf.mxu0
  %401 = vmatprep.mubr.f32.mxu0 0.0
  %402 = vmatmul.mubr.f32.gmra.mxu0 %v174
  %v403 = vpop.f32.mrf.mxu0
  %v404 = vadd.f32 %v86, %v403
  %v405 = vpop.f32.mrf.mxu0
  %406 = vmatprep.mubr.f32.mxu0 0.0
  %407 = vmatmul.mubr.f32.gmra.mxu0 %v177
  %v408 = vpop.f32.mrf.mxu0
  %v409 = vadd.f32 %v86, %v408
  %v410 = vpop.f32.mrf.mxu0
  %411 = vmatprep.mubr.f32.mxu0 0.0
  %412 = vmatmul.mubr.f32.gmra.mxu0 %v180
  %v413 = vpop.f32.mrf.mxu0
  %v414 = vadd.f32 %v86, %v413
  %v415 = vpop.f32.mrf.mxu0
  %416 = vmatprep.mubr.f32.mxu0 0.0
  %417 = vmatmul.mubr.f32.gmra.mxu0 %v183
  %v418 = vpop.f32.mrf.mxu0
  %v419 = vadd.f32 %v86, %v418
  %v420 = vpop.f32.mrf.mxu0
  %421 = vmatprep.mubr.f32.mxu0 0.0
  %422 = vmatmul.mubr.f32.gmra.mxu0 %v186
  %v423 = vpop.f32.mrf.mxu0
  %v424 = vadd.f32 %v86, %v423
  %v425 = vpop.f32.mrf.mxu0
  %426 = vmatprep.mubr.f32.mxu0 0.0
  %427 = vmatmul.mubr.f32.gmra.mxu0 %v189
  %v428 = vpop.f32.mrf.mxu0
  %v429 = vadd.f32 %v86, %v428
  %v430 = vpop.f32.mrf.mxu0
  %431 = vmatprep.mubr.f32.mxu0 0.0
  %432 = vmatmul.mubr.f32.gmra.mxu0 %v192
  %v433 = vpop.f32.mrf.mxu0
  %v434 = vadd.f32 %v86, %v433
  %v435 = vpop.f32.mrf.mxu0
  %436 = vmatprep.mubr.f32.mxu0 0.0
  %437 = vmatmul.mubr.f32.gmra.mxu0 %v195
  %v438 = vpop.f32.mrf.mxu0
  %v439 = vadd.f32 %v86, %v438
  %v440 = vpop.f32.mrf.mxu0
  %441 = vdwg.mxu0
  %v442 = vmax.f32 %v264, 0.0
  %v443 = vmax.f32 %v269, 0.0
  %v444 = vmax.f32 %v274, 0.0
  %v445 = vmax.f32 %v279, 0.0
  %v446 = vmax.f32 %v284, 0.0
  %v447 = vmax.f32 %v289, 0.0
  %v448 = vmax.f32 %v294, 0.0
  %v449 = vmax.f32 %v299, 0.0
  %v450 = vmax.f32 %v304, 0.0
  %v451 = vmax.f32 %v309, 0.0
  %v452 = vmax.f32 %v314, 0.0
  %v453 = vmax.f32 %v319, 0.0
  %v454 = vmax.f32 %v324, 0.0
  %v455 = vmax.f32 %v329, 0.0
  %v456 = vmax.f32 %v334, 0.0
  %v457 = vmax.f32 %v339, 0.0
  %v458 = vmax.f32 %v344, 0.0
  %v459 = vmax.f32 %v349, 0.0
  %v460 = vmax.f32 %v354, 0.0
  %v461 = vmax.f32 %v359, 0.0
  %v462 = vmax.f32 %v364, 0.0
  %v463 = vmax.f32 %v369, 0.0
  %v464 = vmax.f32 %v374, 0.0
  %v465 = vmax.f32 %v379, 0.0
  %v466 = vmax.f32 %v384, 0.0
  %v467 = vmax.f32 %v389, 0.0
  %v468 = vmax.f32 %v394, 0.0
  %v469 = vmax.f32 %v399, 0.0
  %v470 = vmax.f32 %v404, 0.0
  %v471 = vmax.f32 %v409, 0.0
  %v472 = vmax.f32 %v414, 0.0
  %v473 = vmax.f32 %v419, 0.0
  %v474 = vmax.f32 %v424, 0.0
  %v475 = vmax.f32 %v429, 0.0
  %v476 = vmax.f32 %v434, 0.0
  %v477 = vmax.f32 %v439, 0.0
  %v478 = vld [vmem:[%s3] sm:$0xff]
  %v479 = vld [vmem:[%s3 + $0x8] sm:$0xff]
  %v480 = vld [vmem:[%s3 + $0x10] sm:$0xff]
  %v481 = vld [vmem:[%s3 + $0x18] sm:$0xff]
  %v482 = vld [vmem:[%s3 + $0x20] sm:$0xff]
  %v483 = vld [vmem:[%s3 + $0x28] sm:$0xff]
  %v484 = vld [vmem:[%s3 + $0x30] sm:$0xff]
  %v485 = vld [vmem:[%s3 + $0x38] sm:$0xff]
  %v486 = vld [vmem:[%s3 + $0x40] sm:$0xff]
  %v487 = vld [vmem:[%s3 + $0x48] sm:$0xff]
  %v488 = vld [vmem:[%s3 + $0x50] sm:$0xff]
  %v489 = vld [vmem:[%s3 + $0x58] sm:$0xff]
  %v490 = vld [vmem:[%s3 + $0x60] sm:$0xff]
  %v491 = vld [vmem:[%s3 + $0x68] sm:$0xff]
  %v492 = vld [vmem:[%s3 + $0x70] sm:$0xff]
  %v493 = vld [vmem:[%s3 + $0x78] sm:$0xff]
  %v494 = vld [vmem:[%s3 + $0x80] sm:$0xff]
  %v495 = vld [vmem:[%s3 + $0x88] sm:$0xff]
  %v496 = vld [vmem:[%s3 + $0x90] sm:$0xff]
  %v497 = vld [vmem:[%s3 + $0x98] sm:$0xff]
  %v498 = vld [vmem:[%s3 + $0xa0] sm:$0xff]
  %v499 = vld [vmem:[%s3 + $0xa8] sm:$0xff]
  %v500 = vld [vmem:[%s3 + $0xb0] sm:$0xff]
  %v501 = vld [vmem:[%s3 + $0xb8] sm:$0xff]
  %v502 = vld [vmem:[%s3 + $0xc0] sm:$0xff]
  %v503 = vld [vmem:[%s3 + $0xc8] sm:$0xff]
  %v504 = vld [vmem:[%s3 + $0xd0] sm:$0xff]
  %v505 = vld [vmem:[%s3 + $0xd8] sm:$0xff]
  %v506 = vld [vmem:[%s3 + $0xe0] sm:$0xff]
  %v507 = vld [vmem:[%s3 + $0xe8] sm:$0xff]
  %v508 = vld [vmem:[%s3 + $0xf0] sm:$0xff]
  %v509 = vld [vmem:[%s3 + $0xf8] sm:$0xff]
  %v510 = vld [vmem:[%s3 + $0x100] sm:$0xff]
  %v511 = vld [vmem:[%s3 + $0x108] sm:$0xff]
  %v512 = vld [vmem:[%s3 + $0x110] sm:$0xff]
  %v513 = vld [vmem:[%s3 + $0x118] sm:$0xff]
  %v514 = vld [vmem:[%s3 + $0x120] sm:$0xff]
  %v515 = vld [vmem:[%s3 + $0x128] sm:$0xff]
  %v516 = vld [vmem:[%s3 + $0x130] sm:$0xff]
  %v517 = vld [vmem:[%s3 + $0x138] sm:$0xff]
  %v518 = vld [vmem:[%s3 + $0x140] sm:$0xff]
  %v519 = vld [vmem:[%s3 + $0x148] sm:$0xff]
  %v520 = vld [vmem:[%s3 + $0x150] sm:$0xff]
  %v521 = vld [vmem:[%s3 + $0x158] sm:$0xff]
  %v522 = vld [vmem:[%s3 + $0x160] sm:$0xff]
  %v523 = vld [vmem:[%s3 + $0x168] sm:$0xff]
  %v524 = vld [vmem:[%s3 + $0x170] sm:$0xff]
  %v525 = vld [vmem:[%s3 + $0x178] sm:$0xff]
  %v526 = vld [vmem:[%s3 + $0x180] sm:$0xff]
  %v527 = vld [vmem:[%s3 + $0x188] sm:$0xff]
  %v528 = vld [vmem:[%s3 + $0x190] sm:$0xff]
  %v529 = vld [vmem:[%s3 + $0x198] sm:$0xff]
  %v530 = vld [vmem:[%s3 + $0x1a0] sm:$0xff]
  %v531 = vld [vmem:[%s3 + $0x1a8] sm:$0xff]
  %v532 = vld [vmem:[%s3 + $0x1b0] sm:$0xff]
  %v533 = vld [vmem:[%s3 + $0x1b8] sm:$0xff]
  %v534 = vld [vmem:[%s3 + $0x1c0] sm:$0xff]
  %v535 = vld [vmem:[%s3 + $0x1c8] sm:$0xff]
  %v536 = vld [vmem:[%s3 + $0x1d0] sm:$0xff]
  %v537 = vld [vmem:[%s3 + $0x1d8] sm:$0xff]
  %v538 = vld [vmem:[%s3 + $0x1e0] sm:$0xff]
  %v539 = vld [vmem:[%s3 + $0x1e8] sm:$0xff]
  %v540 = vld [vmem:[%s3 + $0x1f0] sm:$0xff]
  %v541 = vld [vmem:[%s3 + $0x1f8] sm:$0xff]
  %v542 = vld [vmem:[%s3 + $0x200] sm:$0xff]
  %v543 = vld [vmem:[%s3 + $0x208] sm:$0xff]
  %v544 = vld [vmem:[%s3 + $0x210] sm:$0xff]
  %v545 = vld [vmem:[%s3 + $0x218] sm:$0xff]
  %v546 = vld [vmem:[%s3 + $0x220] sm:$0xff]
  %v547 = vld [vmem:[%s3 + $0x228] sm:$0xff]
  %v548 = vld [vmem:[%s3 + $0x230] sm:$0xff]
  %v549 = vld [vmem:[%s3 + $0x238] sm:$0xff]
  %v550 = vld [vmem:[%s3 + $0x240] sm:$0xff]
  %v551 = vld [vmem:[%s3 + $0x248] sm:$0xff]
  %v552 = vld [vmem:[%s3 + $0x250] sm:$0xff]
  %v553 = vld [vmem:[%s3 + $0x258] sm:$0xff]
  %v554 = vld [vmem:[%s3 + $0x260] sm:$0xff]
  %v555 = vld [vmem:[%s3 + $0x268] sm:$0xff]
  %v556 = vld [vmem:[%s3 + $0x270] sm:$0xff]
  %v557 = vld [vmem:[%s3 + $0x278] sm:$0xff]
  %v558 = vld [vmem:[%s3 + $0x280] sm:$0xff]
  %v559 = vld [vmem:[%s3 + $0x288] sm:$0xff]
  %v560 = vld [vmem:[%s3 + $0x290] sm:$0xff]
  %v561 = vld [vmem:[%s3 + $0x298] sm:$0xff]
  %v562 = vld [vmem:[%s3 + $0x2a0] sm:$0xff]
  %v563 = vld [vmem:[%s3 + $0x2a8] sm:$0xff]
  %v564 = vld [vmem:[%s3 + $0x2b0] sm:$0xff]
  %v565 = vld [vmem:[%s3 + $0x2b8] sm:$0xff]
  %v566 = vld [vmem:[%s3 + $0x2c0] sm:$0xff]
  %v567 = vld [vmem:[%s3 + $0x2c8] sm:$0xff]
  %v568 = vld [vmem:[%s3 + $0x2d0] sm:$0xff]
  %v569 = vld [vmem:[%s3 + $0x2d8] sm:$0xff]
  %v570 = vld [vmem:[%s3 + $0x2e0] sm:$0xff]
  %v571 = vld [vmem:[%s3 + $0x2e8] sm:$0xff]
  %v572 = vld [vmem:[%s3 + $0x2f0] sm:$0xff]
  %v573 = vld [vmem:[%s3 + $0x2f8] sm:$0xff]
  %v574 = vld [vmem:[%s3 + $0x300] sm:$0xff]
  %v575 = vld [vmem:[%s3 + $0x308] sm:$0xff]
  %v576 = vld [vmem:[%s3 + $0x310] sm:$0xff]
  %v577 = vld [vmem:[%s3 + $0x318] sm:$0xff]
  %v578 = vld [vmem:[%s3 + $0x320] sm:$0xff]
  %v579 = vld [vmem:[%s3 + $0x328] sm:$0xff]
  %v580 = vld [vmem:[%s3 + $0x330] sm:$0xff]
  %v581 = vld [vmem:[%s3 + $0x338] sm:$0xff]
  %v582 = vld [vmem:[%s3 + $0x340] sm:$0xff]
  %v583 = vld [vmem:[%s3 + $0x348] sm:$0xff]
  %v584 = vld [vmem:[%s3 + $0x350] sm:$0xff]
  %v585 = vld [vmem:[%s3 + $0x358] sm:$0xff]
  %v587 = vsel %vm88, %v480, 0
  %v590 = vsel %vm88, %v483, 0
  %v593 = vsel %vm88, %v486, 0
  %v596 = vsel %vm88, %v489, 0
  %v599 = vsel %vm88, %v492, 0
  %v602 = vsel %vm88, %v495, 0
  %v605 = vsel %vm88, %v498, 0
  %v608 = vsel %vm88, %v501, 0
  %v611 = vsel %vm88, %v504, 0
  %v614 = vsel %vm88, %v507, 0
  %v617 = vsel %vm88, %v510, 0
  %v620 = vsel %vm88, %v513, 0
  %v623 = vsel %vm88, %v516, 0
  %v626 = vsel %vm88, %v519, 0
  %v629 = vsel %vm88, %v522, 0
  %v632 = vsel %vm88, %v525, 0
  %v635 = vsel %vm88, %v528, 0
  %v638 = vsel %vm88, %v531, 0
  %v641 = vsel %vm88, %v534, 0
  %v644 = vsel %vm88, %v537, 0
  %v647 = vsel %vm88, %v540, 0
  %v650 = vsel %vm88, %v543, 0
  %v653 = vsel %vm88, %v546, 0
  %v656 = vsel %vm88, %v549, 0
  %v659 = vsel %vm88, %v552, 0
  %v662 = vsel %vm88, %v555, 0
  %v665 = vsel %vm88, %v558, 0
  %v668 = vsel %vm88, %v561, 0
  %v671 = vsel %vm88, %v564, 0
  %v674 = vsel %vm88, %v567, 0
  %v677 = vsel %vm88, %v570, 0
  %v680 = vsel %vm88, %v573, 0
  %v683 = vsel %vm88, %v576, 0
  %v686 = vsel %vm88, %v579, 0
  %v689 = vsel %vm88, %v582, 0
  %v692 = vsel %vm88, %v585, 0
  %694 = vmatprep.subr.mxu0 0.0
  %695 = vmatpush1.msra.mxu0 %v457
  %696 = vmatprep.subr.mxu0 0.0
  %697 = vmatpush1.msra.mxu0 %v456
  %698 = vmatprep.subr.mxu0 0.0
  %699 = vmatpush1.msra.mxu0 %v455
  %700 = vmatprep.subr.mxu0 0.0
  %701 = vmatpush1.msra.mxu0 %v454
  %702 = vmatprep.subr.mxu0 0.0
  %703 = vmatpush1.msra.mxu0 %v453
  %704 = vmatprep.subr.mxu0 0.0
  %705 = vmatpush1.msra.mxu0 %v452
  %706 = vmatprep.subr.mxu0 0.0
  %707 = vmatpush1.msra.mxu0 %v451
  %708 = vmatprep.subr.mxu0 0.0
  %709 = vmatpush1.msra.mxu0 %v450
  %710 = vmatprep.subr.mxu0 0.0
  %711 = vmatpush1.msra.mxu0 %v449
  %712 = vmatprep.subr.mxu0 0.0
  %713 = vmatpush1.msra.mxu0 %v448
  %714 = vmatprep.subr.mxu0 0.0
  %715 = vmatpush1.msra.mxu0 %v447
  %716 = vmatprep.subr.mxu0 0.0
  %717 = vmatpush1.msra.mxu0 %v446
  %718 = vmatprep.subr.mxu0 0.0
  %719 = vmatpush1.msra.mxu0 %v445
  %720 = vmatprep.subr.mxu0 0.0
  %721 = vmatpush1.msra.mxu0 %v444
  %722 = vmatprep.subr.mxu0 0.0
  %723 = vmatpush1.msra.mxu0 %v443
  %724 = vmatprep.subr.mxu0 0.0
  %725 = vmatpush1.msra.mxu0 %v442
  %726 = vmatprep.subr.mxu0 0.0
  %727 = vmatpush2.msra.mxu0 %v473
  %728 = vmatprep.subr.mxu0 0.0
  %729 = vmatpush2.msra.mxu0 %v472
  %730 = vmatprep.subr.mxu0 0.0
  %731 = vmatpush2.msra.mxu0 %v471
  %732 = vmatprep.subr.mxu0 0.0
  %733 = vmatpush2.msra.mxu0 %v470
  %734 = vmatprep.subr.mxu0 0.0
  %735 = vmatpush2.msra.mxu0 %v469
  %736 = vmatprep.subr.mxu0 0.0
  %737 = vmatpush2.msra.mxu0 %v468
  %738 = vmatprep.subr.mxu0 0.0
  %739 = vmatpush2.msra.mxu0 %v467
  %740 = vmatprep.subr.mxu0 0.0
  %741 = vmatpush2.msra.mxu0 %v466
  %742 = vmatprep.subr.mxu0 0.0
  %743 = vmatpush2.msra.mxu0 %v465
  %744 = vmatprep.subr.mxu0 0.0
  %745 = vmatpush2.msra.mxu0 %v464
  %746 = vmatprep.subr.mxu0 0.0
  %747 = vmatpush2.msra.mxu0 %v463
  %748 = vmatprep.subr.mxu0 0.0
  %749 = vmatpush2.msra.mxu0 %v462
  %750 = vmatprep.subr.mxu0 0.0
  %751 = vmatpush2.msra.mxu0 %v461
  %752 = vmatprep.subr.mxu0 0.0
  %753 = vmatpush2.msra.mxu0 %v460
  %754 = vmatprep.subr.mxu0 0.0
  %755 = vmatpush2.msra.mxu0 %v459
  %756 = vmatprep.subr.mxu0 0.0
  %757 = vmatpush2.msra.mxu0 %v458
  %758 = vmatprep.mubr.f32.mxu0 %v479
  %759 = vmatmul.mubr.f32.gmra.mxu0 %v478
  %v760 = vpop.f32.mrf.mxu0
  %v761 = vadd.f32 0.0, %v760
  %v762 = vpop.f32.mrf.mxu0
  %763 = vmatprep.mubr.f32.mxu0 %v482
  %764 = vmatmul.mubr.f32.gmra.mxu0 %v481
  %v765 = vpop.f32.mrf.mxu0
  %v766 = vadd.f32 0.0, %v765
  %v767 = vpop.f32.mrf.mxu0
  %768 = vmatprep.mubr.f32.mxu0 %v485
  %769 = vmatmul.mubr.f32.gmra.mxu0 %v484
  %v770 = vpop.f32.mrf.mxu0
  %v771 = vadd.f32 0.0, %v770
  %v772 = vpop.f32.mrf.mxu0
  %773 = vmatprep.mubr.f32.mxu0 %v488
  %774 = vmatmul.mubr.f32.gmra.mxu0 %v487
  %v775 = vpop.f32.mrf.mxu0
  %v776 = vadd.f32 0.0, %v775
  %v777 = vpop.f32.mrf.mxu0
  %778 = vmatprep.mubr.f32.mxu0 %v491
  %779 = vmatmul.mubr.f32.gmra.mxu0 %v490
  %v780 = vpop.f32.mrf.mxu0
  %v781 = vadd.f32 0.0, %v780
  %v782 = vpop.f32.mrf.mxu0
  %783 = vmatprep.mubr.f32.mxu0 %v494
  %784 = vmatmul.mubr.f32.gmra.mxu0 %v493
  %v785 = vpop.f32.mrf.mxu0
  %v786 = vadd.f32 0.0, %v785
  %v787 = vpop.f32.mrf.mxu0
  %788 = vmatprep.mubr.f32.mxu0 %v497
  %789 = vmatmul.mubr.f32.gmra.mxu0 %v496
  %v790 = vpop.f32.mrf.mxu0
  %v791 = vadd.f32 0.0, %v790
  %v792 = vpop.f32.mrf.mxu0
  %793 = vmatprep.mubr.f32.mxu0 %v500
  %794 = vmatmul.mubr.f32.gmra.mxu0 %v499
  %v795 = vpop.f32.mrf.mxu0
  %v796 = vadd.f32 0.0, %v795
  %v797 = vpop.f32.mrf.mxu0
  %798 = vmatprep.mubr.f32.mxu0 %v503
  %799 = vmatmul.mubr.f32.gmra.mxu0 %v502
  %v800 = vpop.f32.mrf.mxu0
  %v801 = vadd.f32 0.0, %v800
  %v802 = vpop.f32.mrf.mxu0
  %803 = vmatprep.mubr.f32.mxu0 %v506
  %804 = vmatmul.mubr.f32.gmra.mxu0 %v505
  %v805 = vpop.f32.mrf.mxu0
  %v806 = vadd.f32 0.0, %v805
  %v807 = vpop.f32.mrf.mxu0
  %808 = vmatprep.mubr.f32.mxu0 %v509
  %809 = vmatmul.mubr.f32.gmra.mxu0 %v508
  %v810 = vpop.f32.mrf.mxu0
  %v811 = vadd.f32 0.0, %v810
  %v812 = vpop.f32.mrf.mxu0
  %813 = vmatprep.mubr.f32.mxu0 %v512
  %814 = vmatmul.mubr.f32.gmra.mxu0 %v511
  %v815 = vpop.f32.mrf.mxu0
  %v816 = vadd.f32 0.0, %v815
  %v817 = vpop.f32.mrf.mxu0
  %818 = vmatprep.mubr.f32.mxu0 %v515
  %819 = vmatmul.mubr.f32.gmra.mxu0 %v514
  %v820 = vpop.f32.mrf.mxu0
  %v821 = vadd.f32 0.0, %v820
  %v822 = vpop.f32.mrf.mxu0
  %823 = vmatprep.mubr.f32.mxu0 %v518
  %824 = vmatmul.mubr.f32.gmra.mxu0 %v517
  %v825 = vpop.f32.mrf.mxu0
  %v826 = vadd.f32 0.0, %v825
  %v827 = vpop.f32.mrf.mxu0
  %828 = vmatprep.mubr.f32.mxu0 %v521
  %829 = vmatmul.mubr.f32.gmra.mxu0 %v520
  %v830 = vpop.f32.mrf.mxu0
  %v831 = vadd.f32 0.0, %v830
  %v832 = vpop.f32.mrf.mxu0
  %833 = vmatprep.mubr.f32.mxu0 %v524
  %834 = vmatmul.mubr.f32.gmra.mxu0 %v523
  %v835 = vpop.f32.mrf.mxu0
  %v836 = vadd.f32 0.0, %v835
  %v837 = vpop.f32.mrf.mxu0
  %838 = vmatprep.mubr.f32.mxu0 %v527
  %839 = vmatmul.mubr.f32.gmra.mxu0 %v526
  %v840 = vpop.f32.mrf.mxu0
  %v841 = vadd.f32 0.0, %v840
  %v842 = vpop.f32.mrf.mxu0
  %843 = vmatprep.mubr.f32.mxu0 %v530
  %844 = vmatmul.mubr.f32.gmra.mxu0 %v529
  %v845 = vpop.f32.mrf.mxu0
  %v846 = vadd.f32 0.0, %v845
  %v847 = vpop.f32.mrf.mxu0
  %848 = vmatprep.mubr.f32.mxu0 %v533
  %849 = vmatmul.mubr.f32.gmra.mxu0 %v532
  %v850 = vpop.f32.mrf.mxu0
  %v851 = vadd.f32 0.0, %v850
  %v852 = vpop.f32.mrf.mxu0
  %853 = vmatprep.mubr.f32.mxu0 %v536
  %854 = vmatmul.mubr.f32.gmra.mxu0 %v535
  %v855 = vpop.f32.mrf.mxu0
  %v856 = vadd.f32 0.0, %v855
  %v857 = vpop.f32.mrf.mxu0
  %858 = vmatprep.mubr.f32.mxu0 %v539
  %859 = vmatmul.mubr.f32.gmra.mxu0 %v538
  %v860 = vpop.f32.mrf.mxu0
  %v861 = vadd.f32 0.0, %v860
  %v862 = vpop.f32.mrf.mxu0
  %863 = vmatprep.mubr.f32.mxu0 %v542
  %864 = vmatmul.mubr.f32.gmra.mxu0 %v541
  %v865 = vpop.f32.mrf.mxu0
  %v866 = vadd.f32 0.0, %v865
  %v867 = vpop.f32.mrf.mxu0
  %868 = vmatprep.mubr.f32.mxu0 %v545
  %869 = vmatmul.mubr.f32.gmra.mxu0 %v544
  %v870 = vpop.f32.mrf.mxu0
  %v871 = vadd.f32 0.0, %v870
  %v872 = vpop.f32.mrf.mxu0
  %873 = vmatprep.mubr.f32.mxu0 %v548
  %874 = vmatmul.mubr.f32.gmra.mxu0 %v547
  %v875 = vpop.f32.mrf.mxu0
  %v876 = vadd.f32 0.0, %v875
  %v877 = vpop.f32.mrf.mxu0
  %878 = vmatprep.mubr.f32.mxu0 %v551
  %879 = vmatmul.mubr.f32.gmra.mxu0 %v550
  %v880 = vpop.f32.mrf.mxu0
  %v881 = vadd.f32 0.0, %v880
  %v882 = vpop.f32.mrf.mxu0
  %883 = vmatprep.mubr.f32.mxu0 %v554
  %884 = vmatmul.mubr.f32.gmra.mxu0 %v553
  %v885 = vpop.f32.mrf.mxu0
  %v886 = vadd.f32 0.0, %v885
  %v887 = vpop.f32.mrf.mxu0
  %888 = vmatprep.mubr.f32.mxu0 %v557
  %889 = vmatmul.mubr.f32.gmra.mxu0 %v556
  %v890 = vpop.f32.mrf.mxu0
  %v891 = vadd.f32 0.0, %v890
  %v892 = vpop.f32.mrf.mxu0
  %893 = vmatprep.mubr.f32.mxu0 %v560
  %894 = vmatmul.mubr.f32.gmra.mxu0 %v559
  %v895 = vpop.f32.mrf.mxu0
  %v896 = vadd.f32 0.0, %v895
  %v897 = vpop.f32.mrf.mxu0
  %898 = vmatprep.mubr.f32.mxu0 %v563
  %899 = vmatmul.mubr.f32.gmra.mxu0 %v562
  %v900 = vpop.f32.mrf.mxu0
  %v901 = vadd.f32 0.0, %v900
  %v902 = vpop.f32.mrf.mxu0
  %903 = vmatprep.mubr.f32.mxu0 %v566
  %904 = vmatmul.mubr.f32.gmra.mxu0 %v565
  %v905 = vpop.f32.mrf.mxu0
  %v906 = vadd.f32 0.0, %v905
  %v907 = vpop.f32.mrf.mxu0
  %908 = vmatprep.mubr.f32.mxu0 %v569
  %909 = vmatmul.mubr.f32.gmra.mxu0 %v568
  %v910 = vpop.f32.mrf.mxu0
  %v911 = vadd.f32 0.0, %v910
  %v912 = vpop.f32.mrf.mxu0
  %913 = vmatprep.mubr.f32.mxu0 %v572
  %914 = vmatmul.mubr.f32.gmra.mxu0 %v571
  %v915 = vpop.f32.mrf.mxu0
  %v916 = vadd.f32 0.0, %v915
  %v917 = vpop.f32.mrf.mxu0
  %918 = vmatprep.mubr.f32.mxu0 %v575
  %919 = vmatmul.mubr.f32.gmra.mxu0 %v574
  %v920 = vpop.f32.mrf.mxu0
  %v921 = vadd.f32 0.0, %v920
  %v922 = vpop.f32.mrf.mxu0
  %923 = vmatprep.mubr.f32.mxu0 %v578
  %924 = vmatmul.mubr.f32.gmra.mxu0 %v577
  %v925 = vpop.f32.mrf.mxu0
  %v926 = vadd.f32 0.0, %v925
  %v927 = vpop.f32.mrf.mxu0
  %928 = vmatprep.mubr.f32.mxu0 %v581
  %929 = vmatmul.mubr.f32.gmra.mxu0 %v580
  %v930 = vpop.f32.mrf.mxu0
  %v931 = vadd.f32 0.0, %v930
  %v932 = vpop.f32.mrf.mxu0
  %933 = vmatprep.mubr.f32.mxu0 %v584
  %934 = vmatmul.mubr.f32.gmra.mxu0 %v583
  %v935 = vpop.f32.mrf.mxu0
  %v936 = vadd.f32 0.0, %v935
  %v937 = vpop.f32.mrf.mxu0
  %938 = vdwg.mxu0
  %939 = vmatprep.subr.mxu0 0.0
  %940 = vmatpush1.msra.mxu0 0.0
  %941 = vmatprep.subr.mxu0 0.0
  %942 = vmatpush1.msra.mxu0 0.0
  %943 = vmatprep.subr.mxu0 0.0
  %944 = vmatpush1.msra.mxu0 0.0
  %945 = vmatprep.subr.mxu0 0.0
  %946 = vmatpush1.msra.mxu0 0.0
  %947 = vmatprep.subr.mxu0 0.0
  %948 = vmatpush1.msra.mxu0 0.0
  %949 = vmatprep.subr.mxu0 0.0
  %950 = vmatpush1.msra.mxu0 0.0
  %951 = vmatprep.subr.mxu0 0.0
  %952 = vmatpush1.msra.mxu0 0.0
  %953 = vmatprep.subr.mxu0 0.0
  %954 = vmatpush1.msra.mxu0 0.0
  %955 = vmatprep.subr.mxu0 0.0
  %956 = vmatpush1.msra.mxu0 0.0
  %957 = vmatprep.subr.mxu0 0.0
  %958 = vmatpush1.msra.mxu0 0.0
  %959 = vmatprep.subr.mxu0 0.0
  %960 = vmatpush1.msra.mxu0 0.0
  %961 = vmatprep.subr.mxu0 0.0
  %962 = vmatpush1.msra.mxu0 0.0
  %963 = vmatprep.subr.mxu0 0.0
  %964 = vmatpush1.msra.mxu0 %v477
  %965 = vmatprep.subr.mxu0 0.0
  %966 = vmatpush1.msra.mxu0 %v476
  %967 = vmatprep.subr.mxu0 0.0
  %968 = vmatpush1.msra.mxu0 %v475
  %969 = vmatprep.subr.mxu0 0.0
  %970 = vmatpush1.msra.mxu0 %v474
  %971 = vmatprep.subr.mxu0 0.0
  %972 = vmatpush2.msra.mxu0 0.0
  %973 = vmatprep.subr.mxu0 0.0
  %974 = vmatpush2.msra.mxu0 0.0
  %975 = vmatprep.subr.mxu0 0.0
  %976 = vmatpush2.msra.mxu0 0.0
  %977 = vmatprep.subr.mxu0 0.0
  %978 = vmatpush2.msra.mxu0 0.0
  %979 = vmatprep.subr.mxu0 0.0
  %980 = vmatpush2.msra.mxu0 0.0
  %981 = vmatprep.subr.mxu0 0.0
  %982 = vmatpush2.msra.mxu0 0.0
  %983 = vmatprep.subr.mxu0 0.0
  %984 = vmatpush2.msra.mxu0 0.0
  %985 = vmatprep.subr.mxu0 0.0
  %986 = vmatpush2.msra.mxu0 0.0
  %987 = vmatprep.subr.mxu0 0.0
  %988 = vmatpush2.msra.mxu0 0.0
  %989 = vmatprep.subr.mxu0 0.0
  %990 = vmatpush2.msra.mxu0 0.0
  %991 = vmatprep.subr.mxu0 0.0
  %992 = vmatpush2.msra.mxu0 0.0
  %993 = vmatprep.subr.mxu0 0.0
  %994 = vmatpush2.msra.mxu0 0.0
  %995 = vmatprep.subr.mxu0 0.0
  %996 = vmatpush2.msra.mxu0 0.0
  %997 = vmatprep.subr.mxu0 0.0
  %998 = vmatpush2.msra.mxu0 0.0
  %999 = vmatprep.subr.mxu0 0.0
  %1000 = vmatpush2.msra.mxu0 0.0
  %1001 = vmatprep.subr.mxu0 0.0
  %1002 = vmatpush2.msra.mxu0 0.0
  %1003 = vmatprep.mubr.f32.mxu0 0.0
  %1004 = vmatmul.mubr.f32.gmra.mxu0 %v587
  %v1005 = vpop.f32.mrf.mxu0
  %v1006 = vadd.f32 %v761, %v1005
  %v1007 = vpop.f32.mrf.mxu0
  %1008 = vmatprep.mubr.f32.mxu0 0.0
  %1009 = vmatmul.mubr.f32.gmra.mxu0 %v590
  %v1010 = vpop.f32.mrf.mxu0
  %v1011 = vadd.f32 %v766, %v1010
  %v1012 = vpop.f32.mrf.mxu0
  %1013 = vmatprep.mubr.f32.mxu0 0.0
  %1014 = vmatmul.mubr.f32.gmra.mxu0 %v593
  %v1015 = vpop.f32.mrf.mxu0
  %v1016 = vadd.f32 %v771, %v1015
  %v1017 = vpop.f32.mrf.mxu0
  %1018 = vmatprep.mubr.f32.mxu0 0.0
  %1019 = vmatmul.mubr.f32.gmra.mxu0 %v596
  %v1020 = vpop.f32.mrf.mxu0
  %v1021 = vadd.f32 %v776, %v1020
  %v1022 = vpop.f32.mrf.mxu0
  %1023 = vmatprep.mubr.f32.mxu0 0.0
  %1024 = vmatmul.mubr.f32.gmra.mxu0 %v599
  %v1025 = vpop.f32.mrf.mxu0
  %v1026 = vadd.f32 %v781, %v1025
  %v1027 = vpop.f32.mrf.mxu0
  %1028 = vmatprep.mubr.f32.mxu0 0.0
  %1029 = vmatmul.mubr.f32.gmra.mxu0 %v602
  %v1030 = vpop.f32.mrf.mxu0
  %v1031 = vadd.f32 %v786, %v1030
  %v1032 = vpop.f32.mrf.mxu0
  %1033 = vmatprep.mubr.f32.mxu0 0.0
  %1034 = vmatmul.mubr.f32.gmra.mxu0 %v605
  %v1035 = vpop.f32.mrf.mxu0
  %v1036 = vadd.f32 %v791, %v1035
  %v1037 = vpop.f32.mrf.mxu0
  %1038 = vmatprep.mubr.f32.mxu0 0.0
  %1039 = vmatmul.mubr.f32.gmra.mxu0 %v608
  %v1040 = vpop.f32.mrf.mxu0
  %v1041 = vadd.f32 %v796, %v1040
  %v1042 = vpop.f32.mrf.mxu0
  %1043 = vmatprep.mubr.f32.mxu0 0.0
  %1044 = vmatmul.mubr.f32.gmra.mxu0 %v611
  %v1045 = vpop.f32.mrf.mxu0
  %v1046 = vadd.f32 %v801, %v1045
  %v1047 = vpop.f32.mrf.mxu0
  %1048 = vmatprep.mubr.f32.mxu0 0.0
  %1049 = vmatmul.mubr.f32.gmra.mxu0 %v614
  %v1050 = vpop.f32.mrf.mxu0
  %v1051 = vadd.f32 %v806, %v1050
  %v1052 = vpop.f32.mrf.mxu0
  %1053 = vmatprep.mubr.f32.mxu0 0.0
  %1054 = vmatmul.mubr.f32.gmra.mxu0 %v617
  %v1055 = vpop.f32.mrf.mxu0
  %v1056 = vadd.f32 %v811, %v1055
  %v1057 = vpop.f32.mrf.mxu0
  %1058 = vmatprep.mubr.f32.mxu0 0.0
  %1059 = vmatmul.mubr.f32.gmra.mxu0 %v620
  %v1060 = vpop.f32.mrf.mxu0
  %v1061 = vadd.f32 %v816, %v1060
  %v1062 = vpop.f32.mrf.mxu0
  %1063 = vmatprep.mubr.f32.mxu0 0.0
  %1064 = vmatmul.mubr.f32.gmra.mxu0 %v623
  %v1065 = vpop.f32.mrf.mxu0
  %v1066 = vadd.f32 %v821, %v1065
  %v1067 = vpop.f32.mrf.mxu0
  %1068 = vmatprep.mubr.f32.mxu0 0.0
  %1069 = vmatmul.mubr.f32.gmra.mxu0 %v626
  %v1070 = vpop.f32.mrf.mxu0
  %v1071 = vadd.f32 %v826, %v1070
  %v1072 = vpop.f32.mrf.mxu0
  %1073 = vmatprep.mubr.f32.mxu0 0.0
  %1074 = vmatmul.mubr.f32.gmra.mxu0 %v629
  %v1075 = vpop.f32.mrf.mxu0
  %v1076 = vadd.f32 %v831, %v1075
  %v1077 = vpop.f32.mrf.mxu0
  %1078 = vmatprep.mubr.f32.mxu0 0.0
  %1079 = vmatmul.mubr.f32.gmra.mxu0 %v632
  %v1080 = vpop.f32.mrf.mxu0
  %v1081 = vadd.f32 %v836, %v1080
  %v1082 = vpop.f32.mrf.mxu0
  %1083 = vmatprep.mubr.f32.mxu0 0.0
  %1084 = vmatmul.mubr.f32.gmra.mxu0 %v635
  %v1085 = vpop.f32.mrf.mxu0
  %v1086 = vadd.f32 %v841, %v1085
  %v1087 = vpop.f32.mrf.mxu0
  %1088 = vmatprep.mubr.f32.mxu0 0.0
  %1089 = vmatmul.mubr.f32.gmra.mxu0 %v638
  %v1090 = vpop.f32.mrf.mxu0
  %v1091 = vadd.f32 %v846, %v1090
  %v1092 = vpop.f32.mrf.mxu0
  %1093 = vmatprep.mubr.f32.mxu0 0.0
  %1094 = vmatmul.mubr.f32.gmra.mxu0 %v641
  %v1095 = vpop.f32.mrf.mxu0
  %v1096 = vadd.f32 %v851, %v1095
  %v1097 = vpop.f32.mrf.mxu0
  %1098 = vmatprep.mubr.f32.mxu0 0.0
  %1099 = vmatmul.mubr.f32.gmra.mxu0 %v644
  %v1100 = vpop.f32.mrf.mxu0
  %v1101 = vadd.f32 %v856, %v1100
  %v1102 = vpop.f32.mrf.mxu0
  %1103 = vmatprep.mubr.f32.mxu0 0.0
  %1104 = vmatmul.mubr.f32.gmra.mxu0 %v647
  %v1105 = vpop.f32.mrf.mxu0
  %v1106 = vadd.f32 %v861, %v1105
  %v1107 = vpop.f32.mrf.mxu0
  %1108 = vmatprep.mubr.f32.mxu0 0.0
  %1109 = vmatmul.mubr.f32.gmra.mxu0 %v650
  %v1110 = vpop.f32.mrf.mxu0
  %v1111 = vadd.f32 %v866, %v1110
  %v1112 = vpop.f32.mrf.mxu0
  %1113 = vmatprep.mubr.f32.mxu0 0.0
  %1114 = vmatmul.mubr.f32.gmra.mxu0 %v653
  %v1115 = vpop.f32.mrf.mxu0
  %v1116 = vadd.f32 %v871, %v1115
  %v1117 = vpop.f32.mrf.mxu0
  %1118 = vmatprep.mubr.f32.mxu0 0.0
  %1119 = vmatmul.mubr.f32.gmra.mxu0 %v656
  %v1120 = vpop.f32.mrf.mxu0
  %v1121 = vadd.f32 %v876, %v1120
  %v1122 = vpop.f32.mrf.mxu0
  %1123 = vmatprep.mubr.f32.mxu0 0.0
  %1124 = vmatmul.mubr.f32.gmra.mxu0 %v659
  %v1125 = vpop.f32.mrf.mxu0
  %v1126 = vadd.f32 %v881, %v1125
  %v1127 = vpop.f32.mrf.mxu0
  %1128 = vmatprep.mubr.f32.mxu0 0.0
  %1129 = vmatmul.mubr.f32.gmra.mxu0 %v662
  %v1130 = vpop.f32.mrf.mxu0
  %v1131 = vadd.f32 %v886, %v1130
  %v1132 = vpop.f32.mrf.mxu0
  %1133 = vmatprep.mubr.f32.mxu0 0.0
  %1134 = vmatmul.mubr.f32.gmra.mxu0 %v665
  %v1135 = vpop.f32.mrf.mxu0
  %v1136 = vadd.f32 %v891, %v1135
  %v1137 = vpop.f32.mrf.mxu0
  %1138 = vmatprep.mubr.f32.mxu0 0.0
  %1139 = vmatmul.mubr.f32.gmra.mxu0 %v668
  %v1140 = vpop.f32.mrf.mxu0
  %v1141 = vadd.f32 %v896, %v1140
  %v1142 = vpop.f32.mrf.mxu0
  %1143 = vmatprep.mubr.f32.mxu0 0.0
  %1144 = vmatmul.mubr.f32.gmra.mxu0 %v671
  %v1145 = vpop.f32.mrf.mxu0
  %v1146 = vadd.f32 %v901, %v1145
  %v1147 = vpop.f32.mrf.mxu0
  %1148 = vmatprep.mubr.f32.mxu0 0.0
  %1149 = vmatmul.mubr.f32.gmra.mxu0 %v674
  %v1150 = vpop.f32.mrf.mxu0
  %v1151 = vadd.f32 %v906, %v1150
  %v1152 = vpop.f32.mrf.mxu0
  %1153 = vmatprep.mubr.f32.mxu0 0.0
  %1154 = vmatmul.mubr.f32.gmra.mxu0 %v677
  %v1155 = vpop.f32.mrf.mxu0
  %v1156 = vadd.f32 %v911, %v1155
  %v1157 = vpop.f32.mrf.mxu0
  %1158 = vmatprep.mubr.f32.mxu0 0.0
  %1159 = vmatmul.mubr.f32.gmra.mxu0 %v680
  %v1160 = vpop.f32.mrf.mxu0
  %v1161 = vadd.f32 %v916, %v1160
  %v1162 = vpop.f32.mrf.mxu0
  %1163 = vmatprep.mubr.f32.mxu0 0.0
  %1164 = vmatmul.mubr.f32.gmra.mxu0 %v683
  %v1165 = vpop.f32.mrf.mxu0
  %v1166 = vadd.f32 %v921, %v1165
  %v1167 = vpop.f32.mrf.mxu0
  %1168 = vmatprep.mubr.f32.mxu0 0.0
  %1169 = vmatmul.mubr.f32.gmra.mxu0 %v686
  %v1170 = vpop.f32.mrf.mxu0
  %v1171 = vadd.f32 %v926, %v1170
  %v1172 = vpop.f32.mrf.mxu0
  %1173 = vmatprep.mubr.f32.mxu0 0.0
  %1174 = vmatmul.mubr.f32.gmra.mxu0 %v689
  %v1175 = vpop.f32.mrf.mxu0
  %v1176 = vadd.f32 %v931, %v1175
  %v1177 = vpop.f32.mrf.mxu0
  %1178 = vmatprep.mubr.f32.mxu0 0.0
  %1179 = vmatmul.mubr.f32.gmra.mxu0 %v692
  %v1180 = vpop.f32.mrf.mxu0
  %v1181 = vadd.f32 %v936, %v1180
  %v1182 = vpop.f32.mrf.mxu0
  %1183 = vdwg.mxu0
  %v1184 = vld [vmem:[%s4] sm:$0xff]
  %s1185 = scalar_lea.vmem %s3, 864
  %v1186 = vld [vmem:[%s1185] sm:$0xff]
  %v1187 = vld [vmem:[%s1185 + $0x8] sm:$0xff]
  %v1188 = vld [vmem:[%s1185 + $0x10] sm:$0xff]
  %v1189 = vld [vmem:[%s1185 + $0x18] sm:$0xff]
  %v1190 = vld [vmem:[%s1185 + $0x20] sm:$0xff]
  %v1191 = vld [vmem:[%s1185 + $0x28] sm:$0xff]
  %v1192 = vld [vmem:[%s1185 + $0x30] sm:$0xff]
  %v1193 = vld [vmem:[%s1185 + $0x38] sm:$0xff]
  %v1194 = vld [vmem:[%s1185 + $0x40] sm:$0xff]
  %v1195 = vld [vmem:[%s1185 + $0x48] sm:$0xff]
  %v1196 = vld [vmem:[%s1185 + $0x50] sm:$0xff]
  %v1197 = vld [vmem:[%s1185 + $0x58] sm:$0xff]
  %v1198 = vld [vmem:[%s1185 + $0x60] sm:$0xff]
  %v1199 = vld [vmem:[%s1185 + $0x68] sm:$0xff]
  %v1200 = vld [vmem:[%s1185 + $0x70] sm:$0xff]
  %v1201 = vld [vmem:[%s1185 + $0x78] sm:$0xff]
  %v1202 = vld [vmem:[%s1185 + $0x80] sm:$0xff]
  %v1203 = vld [vmem:[%s1185 + $0x88] sm:$0xff]
  %v1204 = vld [vmem:[%s1185 + $0x90] sm:$0xff]
  %v1205 = vld [vmem:[%s1185 + $0x98] sm:$0xff]
  %v1206 = vld [vmem:[%s1185 + $0xa0] sm:$0xff]
  %v1207 = vld [vmem:[%s1185 + $0xa8] sm:$0xff]
  %v1208 = vld [vmem:[%s1185 + $0xb0] sm:$0xff]
  %v1209 = vld [vmem:[%s1185 + $0xb8] sm:$0xff]
  %v1210 = vld [vmem:[%s1185 + $0xc0] sm:$0xff]
  %v1211 = vld [vmem:[%s1185 + $0xc8] sm:$0xff]
  %v1212 = vld [vmem:[%s1185 + $0xd0] sm:$0xff]
  %v1213 = vld [vmem:[%s1185 + $0xd8] sm:$0xff]
  %v1214 = vld [vmem:[%s1185 + $0xe0] sm:$0xff]
  %v1215 = vld [vmem:[%s1185 + $0xe8] sm:$0xff]
  %v1216 = vld [vmem:[%s1185 + $0xf0] sm:$0xff]
  %v1217 = vld [vmem:[%s1185 + $0xf8] sm:$0xff]
  %v1218 = vld [vmem:[%s1185 + $0x100] sm:$0xff]
  %v1219 = vld [vmem:[%s1185 + $0x108] sm:$0xff]
  %v1220 = vld [vmem:[%s1185 + $0x110] sm:$0xff]
  %v1221 = vld [vmem:[%s1185 + $0x118] sm:$0xff]
  %v1222 = vld [vmem:[%s1185 + $0x120] sm:$0xff]
  %v1223 = vld [vmem:[%s1185 + $0x128] sm:$0xff]
  %v1224 = vld [vmem:[%s1185 + $0x130] sm:$0xff]
  %v1225 = vld [vmem:[%s1185 + $0x138] sm:$0xff]
  %v1226 = vld [vmem:[%s1185 + $0x140] sm:$0xff]
  %v1227 = vld [vmem:[%s1185 + $0x148] sm:$0xff]
  %v1228 = vld [vmem:[%s1185 + $0x150] sm:$0xff]
  %v1229 = vld [vmem:[%s1185 + $0x158] sm:$0xff]
  %v1230 = vld [vmem:[%s1185 + $0x160] sm:$0xff]
  %v1231 = vld [vmem:[%s1185 + $0x168] sm:$0xff]
  %v1232 = vld [vmem:[%s1185 + $0x170] sm:$0xff]
  %v1233 = vld [vmem:[%s1185 + $0x178] sm:$0xff]
  %v1234 = vld [vmem:[%s1185 + $0x180] sm:$0xff]
  %v1235 = vld [vmem:[%s1185 + $0x188] sm:$0xff]
  %v1236 = vld [vmem:[%s1185 + $0x190] sm:$0xff]
  %v1237 = vld [vmem:[%s1185 + $0x198] sm:$0xff]
  %v1238 = vld [vmem:[%s1185 + $0x1a0] sm:$0xff]
  %v1239 = vld [vmem:[%s1185 + $0x1a8] sm:$0xff]
  %v1240 = vld [vmem:[%s1185 + $0x1b0] sm:$0xff]
  %v1241 = vld [vmem:[%s1185 + $0x1b8] sm:$0xff]
  %v1242 = vld [vmem:[%s1185 + $0x1c0] sm:$0xff]
  %v1243 = vld [vmem:[%s1185 + $0x1c8] sm:$0xff]
  %v1244 = vld [vmem:[%s1185 + $0x1d0] sm:$0xff]
  %v1245 = vld [vmem:[%s1185 + $0x1d8] sm:$0xff]
  %v1246 = vld [vmem:[%s1185 + $0x1e0] sm:$0xff]
  %v1247 = vld [vmem:[%s1185 + $0x1e8] sm:$0xff]
  %v1248 = vld [vmem:[%s1185 + $0x1f0] sm:$0xff]
  %v1249 = vld [vmem:[%s1185 + $0x1f8] sm:$0xff]
  %v1250 = vld [vmem:[%s1185 + $0x200] sm:$0xff]
  %v1251 = vld [vmem:[%s1185 + $0x208] sm:$0xff]
  %v1252 = vld [vmem:[%s1185 + $0x210] sm:$0xff]
  %v1253 = vld [vmem:[%s1185 + $0x218] sm:$0xff]
  %v1254 = vld [vmem:[%s1185 + $0x220] sm:$0xff]
  %v1255 = vld [vmem:[%s1185 + $0x228] sm:$0xff]
  %v1256 = vld [vmem:[%s1185 + $0x230] sm:$0xff]
  %v1257 = vld [vmem:[%s1185 + $0x238] sm:$0xff]
  %v1258 = vld [vmem:[%s1185 + $0x240] sm:$0xff]
  %v1259 = vld [vmem:[%s1185 + $0x248] sm:$0xff]
  %v1260 = vld [vmem:[%s1185 + $0x250] sm:$0xff]
  %v1261 = vld [vmem:[%s1185 + $0x258] sm:$0xff]
  %v1262 = vld [vmem:[%s1185 + $0x260] sm:$0xff]
  %v1263 = vld [vmem:[%s1185 + $0x268] sm:$0xff]
  %v1264 = vld [vmem:[%s1185 + $0x270] sm:$0xff]
  %v1265 = vld [vmem:[%s1185 + $0x278] sm:$0xff]
  %v1266 = vld [vmem:[%s1185 + $0x280] sm:$0xff]
  %v1267 = vld [vmem:[%s1185 + $0x288] sm:$0xff]
  %v1268 = vld [vmem:[%s1185 + $0x290] sm:$0xff]
  %v1269 = vld [vmem:[%s1185 + $0x298] sm:$0xff]
  %v1270 = vld [vmem:[%s1185 + $0x2a0] sm:$0xff]
  %v1271 = vld [vmem:[%s1185 + $0x2a8] sm:$0xff]
  %v1272 = vld [vmem:[%s1185 + $0x2b0] sm:$0xff]
  %v1273 = vld [vmem:[%s1185 + $0x2b8] sm:$0xff]
  %v1274 = vld [vmem:[%s1185 + $0x2c0] sm:$0xff]
  %v1275 = vld [vmem:[%s1185 + $0x2c8] sm:$0xff]
  %v1276 = vld [vmem:[%s1185 + $0x2d0] sm:$0xff]
  %v1277 = vld [vmem:[%s1185 + $0x2d8] sm:$0xff]
  %v1278 = vld [vmem:[%s1185 + $0x2e0] sm:$0xff]
  %v1279 = vld [vmem:[%s1185 + $0x2e8] sm:$0xff]
  %v1280 = vld [vmem:[%s1185 + $0x2f0] sm:$0xff]
  %v1281 = vld [vmem:[%s1185 + $0x2f8] sm:$0xff]
  %v1282 = vld [vmem:[%s1185 + $0x300] sm:$0xff]
  %v1283 = vld [vmem:[%s1185 + $0x308] sm:$0xff]
  %v1284 = vld [vmem:[%s1185 + $0x310] sm:$0xff]
  %v1285 = vld [vmem:[%s1185 + $0x318] sm:$0xff]
  %v1286 = vld [vmem:[%s1185 + $0x320] sm:$0xff]
  %v1287 = vld [vmem:[%s1185 + $0x328] sm:$0xff]
  %v1288 = vld [vmem:[%s1185 + $0x330] sm:$0xff]
  %v1289 = vld [vmem:[%s1185 + $0x338] sm:$0xff]
  %v1290 = vld [vmem:[%s1185 + $0x340] sm:$0xff]
  %v1291 = vld [vmem:[%s1185 + $0x348] sm:$0xff]
  %v1292 = vld [vmem:[%s1185 + $0x350] sm:$0xff]
  %v1293 = vld [vmem:[%s1185 + $0x358] sm:$0xff]
  %v1295 = vsel %vm88, %v1188, 0
  %v1298 = vsel %vm88, %v1191, 0
  %v1301 = vsel %vm88, %v1194, 0
  %v1304 = vsel %vm88, %v1197, 0
  %v1307 = vsel %vm88, %v1200, 0
  %v1310 = vsel %vm88, %v1203, 0
  %v1313 = vsel %vm88, %v1206, 0
  %v1316 = vsel %vm88, %v1209, 0
  %v1319 = vsel %vm88, %v1212, 0
  %v1322 = vsel %vm88, %v1215, 0
  %v1325 = vsel %vm88, %v1218, 0
  %v1328 = vsel %vm88, %v1221, 0
  %v1331 = vsel %vm88, %v1224, 0
  %v1334 = vsel %vm88, %v1227, 0
  %v1337 = vsel %vm88, %v1230, 0
  %v1340 = vsel %vm88, %v1233, 0
  %v1343 = vsel %vm88, %v1236, 0
  %v1346 = vsel %vm88, %v1239, 0
  %v1349 = vsel %vm88, %v1242, 0
  %v1352 = vsel %vm88, %v1245, 0
  %v1355 = vsel %vm88, %v1248, 0
  %v1358 = vsel %vm88, %v1251, 0
  %v1361 = vsel %vm88, %v1254, 0
  %v1364 = vsel %vm88, %v1257, 0
  %v1367 = vsel %vm88, %v1260, 0
  %v1370 = vsel %vm88, %v1263, 0
  %v1373 = vsel %vm88, %v1266, 0
  %v1376 = vsel %vm88, %v1269, 0
  %v1379 = vsel %vm88, %v1272, 0
  %v1382 = vsel %vm88, %v1275, 0
  %v1385 = vsel %vm88, %v1278, 0
  %v1388 = vsel %vm88, %v1281, 0
  %v1391 = vsel %vm88, %v1284, 0
  %v1394 = vsel %vm88, %v1287, 0
  %v1397 = vsel %vm88, %v1290, 0
  %v1400 = vsel %vm88, %v1293, 0
  %1402 = vmatprep.subr.mxu0 0.0
  %1403 = vmatpush1.msra.mxu0 %v457
  %1404 = vmatprep.subr.mxu0 0.0
  %1405 = vmatpush1.msra.mxu0 %v456
  %1406 = vmatprep.subr.mxu0 0.0
  %1407 = vmatpush1.msra.mxu0 %v455
  %1408 = vmatprep.subr.mxu0 0.0
  %1409 = vmatpush1.msra.mxu0 %v454
  %1410 = vmatprep.subr.mxu0 0.0
  %1411 = vmatpush1.msra.mxu0 %v453
  %1412 = vmatprep.subr.mxu0 0.0
  %1413 = vmatpush1.msra.mxu0 %v452
  %1414 = vmatprep.subr.mxu0 0.0
  %1415 = vmatpush1.msra.mxu0 %v451
  %1416 = vmatprep.subr.mxu0 0.0
  %1417 = vmatpush1.msra.mxu0 %v450
  %1418 = vmatprep.subr.mxu0 0.0
  %1419 = vmatpush1.msra.mxu0 %v449
  %1420 = vmatprep.subr.mxu0 0.0
  %1421 = vmatpush1.msra.mxu0 %v448
  %1422 = vmatprep.subr.mxu0 0.0
  %1423 = vmatpush1.msra.mxu0 %v447
  %1424 = vmatprep.subr.mxu0 0.0
  %1425 = vmatpush1.msra.mxu0 %v446
  %1426 = vmatprep.subr.mxu0 0.0
  %1427 = vmatpush1.msra.mxu0 %v445
  %1428 = vmatprep.subr.mxu0 0.0
  %1429 = vmatpush1.msra.mxu0 %v444
  %1430 = vmatprep.subr.mxu0 0.0
  %1431 = vmatpush1.msra.mxu0 %v443
  %1432 = vmatprep.subr.mxu0 0.0
  %1433 = vmatpush1.msra.mxu0 %v442
  %1434 = vmatprep.subr.mxu0 0.0
  %1435 = vmatpush2.msra.mxu0 %v473
  %1436 = vmatprep.subr.mxu0 0.0
  %1437 = vmatpush2.msra.mxu0 %v472
  %1438 = vmatprep.subr.mxu0 0.0
  %1439 = vmatpush2.msra.mxu0 %v471
  %1440 = vmatprep.subr.mxu0 0.0
  %1441 = vmatpush2.msra.mxu0 %v470
  %1442 = vmatprep.subr.mxu0 0.0
  %1443 = vmatpush2.msra.mxu0 %v469
  %1444 = vmatprep.subr.mxu0 0.0
  %1445 = vmatpush2.msra.mxu0 %v468
  %1446 = vmatprep.subr.mxu0 0.0
  %1447 = vmatpush2.msra.mxu0 %v467
  %1448 = vmatprep.subr.mxu0 0.0
  %1449 = vmatpush2.msra.mxu0 %v466
  %1450 = vmatprep.subr.mxu0 0.0
  %1451 = vmatpush2.msra.mxu0 %v465
  %1452 = vmatprep.subr.mxu0 0.0
  %1453 = vmatpush2.msra.mxu0 %v464
  %1454 = vmatprep.subr.mxu0 0.0
  %1455 = vmatpush2.msra.mxu0 %v463
  %1456 = vmatprep.subr.mxu0 0.0
  %1457 = vmatpush2.msra.mxu0 %v462
  %1458 = vmatprep.subr.mxu0 0.0
  %1459 = vmatpush2.msra.mxu0 %v461
  %1460 = vmatprep.subr.mxu0 0.0
  %1461 = vmatpush2.msra.mxu0 %v460
  %1462 = vmatprep.subr.mxu0 0.0
  %1463 = vmatpush2.msra.mxu0 %v459
  %1464 = vmatprep.subr.mxu0 0.0
  %1465 = vmatpush2.msra.mxu0 %v458
  %1466 = vmatprep.mubr.f32.mxu0 %v1187
  %1467 = vmatmul.mubr.f32.gmra.mxu0 %v1186
  %v1468 = vpop.f32.mrf.mxu0
  %v1469 = vadd.f32 0.0, %v1468
  %v1470 = vpop.f32.mrf.mxu0
  %1471 = vmatprep.mubr.f32.mxu0 %v1190
  %1472 = vmatmul.mubr.f32.gmra.mxu0 %v1189
  %v1473 = vpop.f32.mrf.mxu0
  %v1474 = vadd.f32 0.0, %v1473
  %v1475 = vpop.f32.mrf.mxu0
  %1476 = vmatprep.mubr.f32.mxu0 %v1193
  %1477 = vmatmul.mubr.f32.gmra.mxu0 %v1192
  %v1478 = vpop.f32.mrf.mxu0
  %v1479 = vadd.f32 0.0, %v1478
  %v1480 = vpop.f32.mrf.mxu0
  %1481 = vmatprep.mubr.f32.mxu0 %v1196
  %1482 = vmatmul.mubr.f32.gmra.mxu0 %v1195
  %v1483 = vpop.f32.mrf.mxu0
  %v1484 = vadd.f32 0.0, %v1483
  %v1485 = vpop.f32.mrf.mxu0
  %1486 = vmatprep.mubr.f32.mxu0 %v1199
  %1487 = vmatmul.mubr.f32.gmra.mxu0 %v1198
  %v1488 = vpop.f32.mrf.mxu0
  %v1489 = vadd.f32 0.0, %v1488
  %v1490 = vpop.f32.mrf.mxu0
  %1491 = vmatprep.mubr.f32.mxu0 %v1202
  %1492 = vmatmul.mubr.f32.gmra.mxu0 %v1201
  %v1493 = vpop.f32.mrf.mxu0
  %v1494 = vadd.f32 0.0, %v1493
  %v1495 = vpop.f32.mrf.mxu0
  %1496 = vmatprep.mubr.f32.mxu0 %v1205
  %1497 = vmatmul.mubr.f32.gmra.mxu0 %v1204
  %v1498 = vpop.f32.mrf.mxu0
  %v1499 = vadd.f32 0.0, %v1498
  %v1500 = vpop.f32.mrf.mxu0
  %1501 = vmatprep.mubr.f32.mxu0 %v1208
  %1502 = vmatmul.mubr.f32.gmra.mxu0 %v1207
  %v1503 = vpop.f32.mrf.mxu0
  %v1504 = vadd.f32 0.0, %v1503
  %v1505 = vpop.f32.mrf.mxu0
  %1506 = vmatprep.mubr.f32.mxu0 %v1211
  %1507 = vmatmul.mubr.f32.gmra.mxu0 %v1210
  %v1508 = vpop.f32.mrf.mxu0
  %v1509 = vadd.f32 0.0, %v1508
  %v1510 = vpop.f32.mrf.mxu0
  %1511 = vmatprep.mubr.f32.mxu0 %v1214
  %1512 = vmatmul.mubr.f32.gmra.mxu0 %v1213
  %v1513 = vpop.f32.mrf.mxu0
  %v1514 = vadd.f32 0.0, %v1513
  %v1515 = vpop.f32.mrf.mxu0
  %1516 = vmatprep.mubr.f32.mxu0 %v1217
  %1517 = vmatmul.mubr.f32.gmra.mxu0 %v1216
  %v1518 = vpop.f32.mrf.mxu0
  %v1519 = vadd.f32 0.0, %v1518
  %v1520 = vpop.f32.mrf.mxu0
  %1521 = vmatprep.mubr.f32.mxu0 %v1220
  %1522 = vmatmul.mubr.f32.gmra.mxu0 %v1219
  %v1523 = vpop.f32.mrf.mxu0
  %v1524 = vadd.f32 0.0, %v1523
  %v1525 = vpop.f32.mrf.mxu0
  %1526 = vmatprep.mubr.f32.mxu0 %v1223
  %1527 = vmatmul.mubr.f32.gmra.mxu0 %v1222
  %v1528 = vpop.f32.mrf.mxu0
  %v1529 = vadd.f32 0.0, %v1528
  %v1530 = vpop.f32.mrf.mxu0
  %1531 = vmatprep.mubr.f32.mxu0 %v1226
  %1532 = vmatmul.mubr.f32.gmra.mxu0 %v1225
  %v1533 = vpop.f32.mrf.mxu0
  %v1534 = vadd.f32 0.0, %v1533
  %v1535 = vpop.f32.mrf.mxu0
  %1536 = vmatprep.mubr.f32.mxu0 %v1229
  %1537 = vmatmul.mubr.f32.gmra.mxu0 %v1228
  %v1538 = vpop.f32.mrf.mxu0
  %v1539 = vadd.f32 0.0, %v1538
  %v1540 = vpop.f32.mrf.mxu0
  %1541 = vmatprep.mubr.f32.mxu0 %v1232
  %1542 = vmatmul.mubr.f32.gmra.mxu0 %v1231
  %v1543 = vpop.f32.mrf.mxu0
  %v1544 = vadd.f32 0.0, %v1543
  %v1545 = vpop.f32.mrf.mxu0
  %1546 = vmatprep.mubr.f32.mxu0 %v1235
  %1547 = vmatmul.mubr.f32.gmra.mxu0 %v1234
  %v1548 = vpop.f32.mrf.mxu0
  %v1549 = vadd.f32 0.0, %v1548
  %v1550 = vpop.f32.mrf.mxu0
  %1551 = vmatprep.mubr.f32.mxu0 %v1238
  %1552 = vmatmul.mubr.f32.gmra.mxu0 %v1237
  %v1553 = vpop.f32.mrf.mxu0
  %v1554 = vadd.f32 0.0, %v1553
  %v1555 = vpop.f32.mrf.mxu0
  %1556 = vmatprep.mubr.f32.mxu0 %v1241
  %1557 = vmatmul.mubr.f32.gmra.mxu0 %v1240
  %v1558 = vpop.f32.mrf.mxu0
  %v1559 = vadd.f32 0.0, %v1558
  %v1560 = vpop.f32.mrf.mxu0
  %1561 = vmatprep.mubr.f32.mxu0 %v1244
  %1562 = vmatmul.mubr.f32.gmra.mxu0 %v1243
  %v1563 = vpop.f32.mrf.mxu0
  %v1564 = vadd.f32 0.0, %v1563
  %v1565 = vpop.f32.mrf.mxu0
  %1566 = vmatprep.mubr.f32.mxu0 %v1247
  %1567 = vmatmul.mubr.f32.gmra.mxu0 %v1246
  %v1568 = vpop.f32.mrf.mxu0
  %v1569 = vadd.f32 0.0, %v1568
  %v1570 = vpop.f32.mrf.mxu0
  %1571 = vmatprep.mubr.f32.mxu0 %v1250
  %1572 = vmatmul.mubr.f32.gmra.mxu0 %v1249
  %v1573 = vpop.f32.mrf.mxu0
  %v1574 = vadd.f32 0.0, %v1573
  %v1575 = vpop.f32.mrf.mxu0
  %1576 = vmatprep.mubr.f32.mxu0 %v1253
  %1577 = vmatmul.mubr.f32.gmra.mxu0 %v1252
  %v1578 = vpop.f32.mrf.mxu0
  %v1579 = vadd.f32 0.0, %v1578
  %v1580 = vpop.f32.mrf.mxu0
  %1581 = vmatprep.mubr.f32.mxu0 %v1256
  %1582 = vmatmul.mubr.f32.gmra.mxu0 %v1255
  %v1583 = vpop.f32.mrf.mxu0
  %v1584 = vadd.f32 0.0, %v1583
  %v1585 = vpop.f32.mrf.mxu0
  %1586 = vmatprep.mubr.f32.mxu0 %v1259
  %1587 = vmatmul.mubr.f32.gmra.mxu0 %v1258
  %v1588 = vpop.f32.mrf.mxu0
  %v1589 = vadd.f32 0.0, %v1588
  %v1590 = vpop.f32.mrf.mxu0
  %1591 = vmatprep.mubr.f32.mxu0 %v1262
  %1592 = vmatmul.mubr.f32.gmra.mxu0 %v1261
  %v1593 = vpop.f32.mrf.mxu0
  %v1594 = vadd.f32 0.0, %v1593
  %v1595 = vpop.f32.mrf.mxu0
  %1596 = vmatprep.mubr.f32.mxu0 %v1265
  %1597 = vmatmul.mubr.f32.gmra.mxu0 %v1264
  %v1598 = vpop.f32.mrf.mxu0
  %v1599 = vadd.f32 0.0, %v1598
  %v1600 = vpop.f32.mrf.mxu0
  %1601 = vmatprep.mubr.f32.mxu0 %v1268
  %1602 = vmatmul.mubr.f32.gmra.mxu0 %v1267
  %v1603 = vpop.f32.mrf.mxu0
  %v1604 = vadd.f32 0.0, %v1603
  %v1605 = vpop.f32.mrf.mxu0
  %1606 = vmatprep.mubr.f32.mxu0 %v1271
  %1607 = vmatmul.mubr.f32.gmra.mxu0 %v1270
  %v1608 = vpop.f32.mrf.mxu0
  %v1609 = vadd.f32 0.0, %v1608
  %v1610 = vpop.f32.mrf.mxu0
  %1611 = vmatprep.mubr.f32.mxu0 %v1274
  %1612 = vmatmul.mubr.f32.gmra.mxu0 %v1273
  %v1613 = vpop.f32.mrf.mxu0
  %v1614 = vadd.f32 0.0, %v1613
  %v1615 = vpop.f32.mrf.mxu0
  %1616 = vmatprep.mubr.f32.mxu0 %v1277
  %1617 = vmatmul.mubr.f32.gmra.mxu0 %v1276
  %v1618 = vpop.f32.mrf.mxu0
  %v1619 = vadd.f32 0.0, %v1618
  %v1620 = vpop.f32.mrf.mxu0
  %1621 = vmatprep.mubr.f32.mxu0 %v1280
  %1622 = vmatmul.mubr.f32.gmra.mxu0 %v1279
  %v1623 = vpop.f32.mrf.mxu0
  %v1624 = vadd.f32 0.0, %v1623
  %v1625 = vpop.f32.mrf.mxu0
  %1626 = vmatprep.mubr.f32.mxu0 %v1283
  %1627 = vmatmul.mubr.f32.gmra.mxu0 %v1282
  %v1628 = vpop.f32.mrf.mxu0
  %v1629 = vadd.f32 0.0, %v1628
  %v1630 = vpop.f32.mrf.mxu0
  %1631 = vmatprep.mubr.f32.mxu0 %v1286
  %1632 = vmatmul.mubr.f32.gmra.mxu0 %v1285
  %v1633 = vpop.f32.mrf.mxu0
  %v1634 = vadd.f32 0.0, %v1633
  %v1635 = vpop.f32.mrf.mxu0
  %1636 = vmatprep.mubr.f32.mxu0 %v1289
  %1637 = vmatmul.mubr.f32.gmra.mxu0 %v1288
  %v1638 = vpop.f32.mrf.mxu0
  %v1639 = vadd.f32 0.0, %v1638
  %v1640 = vpop.f32.mrf.mxu0
  %1641 = vmatprep.mubr.f32.mxu0 %v1292
  %1642 = vmatmul.mubr.f32.gmra.mxu0 %v1291
  %v1643 = vpop.f32.mrf.mxu0
  %v1644 = vadd.f32 0.0, %v1643
  %v1645 = vpop.f32.mrf.mxu0
  %1646 = vdwg.mxu0
  %1647 = vmatprep.subr.mxu0 0.0
  %1648 = vmatpush1.msra.mxu0 0.0
  %1649 = vmatprep.subr.mxu0 0.0
  %1650 = vmatpush1.msra.mxu0 0.0
  %1651 = vmatprep.subr.mxu0 0.0
  %1652 = vmatpush1.msra.mxu0 0.0
  %1653 = vmatprep.subr.mxu0 0.0
  %1654 = vmatpush1.msra.mxu0 0.0
  %1655 = vmatprep.subr.mxu0 0.0
  %1656 = vmatpush1.msra.mxu0 0.0
  %1657 = vmatprep.subr.mxu0 0.0
  %1658 = vmatpush1.msra.mxu0 0.0
  %1659 = vmatprep.subr.mxu0 0.0
  %1660 = vmatpush1.msra.mxu0 0.0
  %1661 = vmatprep.subr.mxu0 0.0
  %1662 = vmatpush1.msra.mxu0 0.0
  %1663 = vmatprep.subr.mxu0 0.0
  %1664 = vmatpush1.msra.mxu0 0.0
  %1665 = vmatprep.subr.mxu0 0.0
  %1666 = vmatpush1.msra.mxu0 0.0
  %1667 = vmatprep.subr.mxu0 0.0
  %1668 = vmatpush1.msra.mxu0 0.0
  %1669 = vmatprep.subr.mxu0 0.0
  %1670 = vmatpush1.msra.mxu0 0.0
  %1671 = vmatprep.subr.mxu0 0.0
  %1672 = vmatpush1.msra.mxu0 %v477
  %1673 = vmatprep.subr.mxu0 0.0
  %1674 = vmatpush1.msra.mxu0 %v476
  %1675 = vmatprep.subr.mxu0 0.0
  %1676 = vmatpush1.msra.mxu0 %v475
  %1677 = vmatprep.subr.mxu0 0.0
  %1678 = vmatpush1.msra.mxu0 %v474
  %1679 = vmatprep.subr.mxu0 0.0
  %1680 = vmatpush2.msra.mxu0 0.0
  %1681 = vmatprep.subr.mxu0 0.0
  %1682 = vmatpush2.msra.mxu0 0.0
  %1683 = vmatprep.subr.mxu0 0.0
  %1684 = vmatpush2.msra.mxu0 0.0
  %1685 = vmatprep.subr.mxu0 0.0
  %1686 = vmatpush2.msra.mxu0 0.0
  %1687 = vmatprep.subr.mxu0 0.0
  %1688 = vmatpush2.msra.mxu0 0.0
  %1689 = vmatprep.subr.mxu0 0.0
  %1690 = vmatpush2.msra.mxu0 0.0
  %1691 = vmatprep.subr.mxu0 0.0
  %1692 = vmatpush2.msra.mxu0 0.0
  %1693 = vmatprep.subr.mxu0 0.0
  %1694 = vmatpush2.msra.mxu0 0.0
  %1695 = vmatprep.subr.mxu0 0.0
  %1696 = vmatpush2.msra.mxu0 0.0
  %1697 = vmatprep.subr.mxu0 0.0
  %1698 = vmatpush2.msra.mxu0 0.0
  %1699 = vmatprep.subr.mxu0 0.0
  %1700 = vmatpush2.msra.mxu0 0.0
  %1701 = vmatprep.subr.mxu0 0.0
  %1702 = vmatpush2.msra.mxu0 0.0
  %1703 = vmatprep.subr.mxu0 0.0
  %1704 = vmatpush2.msra.mxu0 0.0
  %1705 = vmatprep.subr.mxu0 0.0
  %1706 = vmatpush2.msra.mxu0 0.0
  %1707 = vmatprep.subr.mxu0 0.0
  %1708 = vmatpush2.msra.mxu0 0.0
  %1709 = vmatprep.subr.mxu0 0.0
  %1710 = vmatpush2.msra.mxu0 0.0
  %1711 = vmatprep.mubr.f32.mxu0 0.0
  %1712 = vmatmul.mubr.f32.gmra.mxu0 %v1295
  %v1713 = vpop.f32.mrf.mxu0
  %v1714 = vadd.f32 %v1469, %v1713
  %v1715 = vpop.f32.mrf.mxu0
  %1716 = vmatprep.mubr.f32.mxu0 0.0
  %1717 = vmatmul.mubr.f32.gmra.mxu0 %v1298
  %v1718 = vpop.f32.mrf.mxu0
  %v1719 = vadd.f32 %v1474, %v1718
  %v1720 = vpop.f32.mrf.mxu0
  %1721 = vmatprep.mubr.f32.mxu0 0.0
  %1722 = vmatmul.mubr.f32.gmra.mxu0 %v1301
  %v1723 = vpop.f32.mrf.mxu0
  %v1724 = vadd.f32 %v1479, %v1723
  %v1725 = vpop.f32.mrf.mxu0
  %1726 = vmatprep.mubr.f32.mxu0 0.0
  %1727 = vmatmul.mubr.f32.gmra.mxu0 %v1304
  %v1728 = vpop.f32.mrf.mxu0
  %v1729 = vadd.f32 %v1484, %v1728
  %v1730 = vpop.f32.mrf.mxu0
  %1731 = vmatprep.mubr.f32.mxu0 0.0
  %1732 = vmatmul.mubr.f32.gmra.mxu0 %v1307
  %v1733 = vpop.f32.mrf.mxu0
  %v1734 = vadd.f32 %v1489, %v1733
  %v1735 = vpop.f32.mrf.mxu0
  %1736 = vmatprep.mubr.f32.mxu0 0.0
  %1737 = vmatmul.mubr.f32.gmra.mxu0 %v1310
  %v1738 = vpop.f32.mrf.mxu0
  %v1739 = vadd.f32 %v1494, %v1738
  %v1740 = vpop.f32.mrf.mxu0
  %1741 = vmatprep.mubr.f32.mxu0 0.0
  %1742 = vmatmul.mubr.f32.gmra.mxu0 %v1313
  %v1743 = vpop.f32.mrf.mxu0
  %v1744 = vadd.f32 %v1499, %v1743
  %v1745 = vpop.f32.mrf.mxu0
  %1746 = vmatprep.mubr.f32.mxu0 0.0
  %1747 = vmatmul.mubr.f32.gmra.mxu0 %v1316
  %v1748 = vpop.f32.mrf.mxu0
  %v1749 = vadd.f32 %v1504, %v1748
  %v1750 = vpop.f32.mrf.mxu0
  %1751 = vmatprep.mubr.f32.mxu0 0.0
  %1752 = vmatmul.mubr.f32.gmra.mxu0 %v1319
  %v1753 = vpop.f32.mrf.mxu0
  %v1754 = vadd.f32 %v1509, %v1753
  %v1755 = vpop.f32.mrf.mxu0
  %1756 = vmatprep.mubr.f32.mxu0 0.0
  %1757 = vmatmul.mubr.f32.gmra.mxu0 %v1322
  %v1758 = vpop.f32.mrf.mxu0
  %v1759 = vadd.f32 %v1514, %v1758
  %v1760 = vpop.f32.mrf.mxu0
  %1761 = vmatprep.mubr.f32.mxu0 0.0
  %1762 = vmatmul.mubr.f32.gmra.mxu0 %v1325
  %v1763 = vpop.f32.mrf.mxu0
  %v1764 = vadd.f32 %v1519, %v1763
  %v1765 = vpop.f32.mrf.mxu0
  %1766 = vmatprep.mubr.f32.mxu0 0.0
  %1767 = vmatmul.mubr.f32.gmra.mxu0 %v1328
  %v1768 = vpop.f32.mrf.mxu0
  %v1769 = vadd.f32 %v1524, %v1768
  %v1770 = vpop.f32.mrf.mxu0
  %1771 = vmatprep.mubr.f32.mxu0 0.0
  %1772 = vmatmul.mubr.f32.gmra.mxu0 %v1331
  %v1773 = vpop.f32.mrf.mxu0
  %v1774 = vadd.f32 %v1529, %v1773
  %v1775 = vpop.f32.mrf.mxu0
  %1776 = vmatprep.mubr.f32.mxu0 0.0
  %1777 = vmatmul.mubr.f32.gmra.mxu0 %v1334
  %v1778 = vpop.f32.mrf.mxu0
  %v1779 = vadd.f32 %v1534, %v1778
  %v1780 = vpop.f32.mrf.mxu0
  %1781 = vmatprep.mubr.f32.mxu0 0.0
  %1782 = vmatmul.mubr.f32.gmra.mxu0 %v1337
  %v1783 = vpop.f32.mrf.mxu0
  %v1784 = vadd.f32 %v1539, %v1783
  %v1785 = vpop.f32.mrf.mxu0
  %1786 = vmatprep.mubr.f32.mxu0 0.0
  %1787 = vmatmul.mubr.f32.gmra.mxu0 %v1340
  %v1788 = vpop.f32.mrf.mxu0
  %v1789 = vadd.f32 %v1544, %v1788
  %v1790 = vpop.f32.mrf.mxu0
  %1791 = vmatprep.mubr.f32.mxu0 0.0
  %1792 = vmatmul.mubr.f32.gmra.mxu0 %v1343
  %v1793 = vpop.f32.mrf.mxu0
  %v1794 = vadd.f32 %v1549, %v1793
  %v1795 = vpop.f32.mrf.mxu0
  %1796 = vmatprep.mubr.f32.mxu0 0.0
  %1797 = vmatmul.mubr.f32.gmra.mxu0 %v1346
  %v1798 = vpop.f32.mrf.mxu0
  %v1799 = vadd.f32 %v1554, %v1798
  %v1800 = vpop.f32.mrf.mxu0
  %1801 = vmatprep.mubr.f32.mxu0 0.0
  %1802 = vmatmul.mubr.f32.gmra.mxu0 %v1349
  %v1803 = vpop.f32.mrf.mxu0
  %v1804 = vadd.f32 %v1559, %v1803
  %v1805 = vpop.f32.mrf.mxu0
  %1806 = vmatprep.mubr.f32.mxu0 0.0
  %1807 = vmatmul.mubr.f32.gmra.mxu0 %v1352
  %v1808 = vpop.f32.mrf.mxu0
  %v1809 = vadd.f32 %v1564, %v1808
  %v1810 = vpop.f32.mrf.mxu0
  %1811 = vmatprep.mubr.f32.mxu0 0.0
  %1812 = vmatmul.mubr.f32.gmra.mxu0 %v1355
  %v1813 = vpop.f32.mrf.mxu0
  %v1814 = vadd.f32 %v1569, %v1813
  %v1815 = vpop.f32.mrf.mxu0
  %1816 = vmatprep.mubr.f32.mxu0 0.0
  %1817 = vmatmul.mubr.f32.gmra.mxu0 %v1358
  %v1818 = vpop.f32.mrf.mxu0
  %v1819 = vadd.f32 %v1574, %v1818
  %v1820 = vpop.f32.mrf.mxu0
  %1821 = vmatprep.mubr.f32.mxu0 0.0
  %1822 = vmatmul.mubr.f32.gmra.mxu0 %v1361
  %v1823 = vpop.f32.mrf.mxu0
  %v1824 = vadd.f32 %v1579, %v1823
  %v1825 = vpop.f32.mrf.mxu0
  %1826 = vmatprep.mubr.f32.mxu0 0.0
  %1827 = vmatmul.mubr.f32.gmra.mxu0 %v1364
  %v1828 = vpop.f32.mrf.mxu0
  %v1829 = vadd.f32 %v1584, %v1828
  %v1830 = vpop.f32.mrf.mxu0
  %1831 = vmatprep.mubr.f32.mxu0 0.0
  %1832 = vmatmul.mubr.f32.gmra.mxu0 %v1367
  %v1833 = vpop.f32.mrf.mxu0
  %v1834 = vadd.f32 %v1589, %v1833
  %v1835 = vpop.f32.mrf.mxu0
  %1836 = vmatprep.mubr.f32.mxu0 0.0
  %1837 = vmatmul.mubr.f32.gmra.mxu0 %v1370
  %v1838 = vpop.f32.mrf.mxu0
  %v1839 = vadd.f32 %v1594, %v1838
  %v1840 = vpop.f32.mrf.mxu0
  %1841 = vmatprep.mubr.f32.mxu0 0.0
  %1842 = vmatmul.mubr.f32.gmra.mxu0 %v1373
  %v1843 = vpop.f32.mrf.mxu0
  %v1844 = vadd.f32 %v1599, %v1843
  %v1845 = vpop.f32.mrf.mxu0
  %1846 = vmatprep.mubr.f32.mxu0 0.0
  %1847 = vmatmul.mubr.f32.gmra.mxu0 %v1376
  %v1848 = vpop.f32.mrf.mxu0
  %v1849 = vadd.f32 %v1604, %v1848
  %v1850 = vpop.f32.mrf.mxu0
  %1851 = vmatprep.mubr.f32.mxu0 0.0
  %1852 = vmatmul.mubr.f32.gmra.mxu0 %v1379
  %v1853 = vpop.f32.mrf.mxu0
  %v1854 = vadd.f32 %v1609, %v1853
  %v1855 = vpop.f32.mrf.mxu0
  %1856 = vmatprep.mubr.f32.mxu0 0.0
  %1857 = vmatmul.mubr.f32.gmra.mxu0 %v1382
  %v1858 = vpop.f32.mrf.mxu0
  %v1859 = vadd.f32 %v1614, %v1858
  %v1860 = vpop.f32.mrf.mxu0
  %1861 = vmatprep.mubr.f32.mxu0 0.0
  %1862 = vmatmul.mubr.f32.gmra.mxu0 %v1385
  %v1863 = vpop.f32.mrf.mxu0
  %v1864 = vadd.f32 %v1619, %v1863
  %v1865 = vpop.f32.mrf.mxu0
  %1866 = vmatprep.mubr.f32.mxu0 0.0
  %1867 = vmatmul.mubr.f32.gmra.mxu0 %v1388
  %v1868 = vpop.f32.mrf.mxu0
  %v1869 = vadd.f32 %v1624, %v1868
  %v1870 = vpop.f32.mrf.mxu0
  %1871 = vmatprep.mubr.f32.mxu0 0.0
  %1872 = vmatmul.mubr.f32.gmra.mxu0 %v1391
  %v1873 = vpop.f32.mrf.mxu0
  %v1874 = vadd.f32 %v1629, %v1873
  %v1875 = vpop.f32.mrf.mxu0
  %1876 = vmatprep.mubr.f32.mxu0 0.0
  %1877 = vmatmul.mubr.f32.gmra.mxu0 %v1394
  %v1878 = vpop.f32.mrf.mxu0
  %v1879 = vadd.f32 %v1634, %v1878
  %v1880 = vpop.f32.mrf.mxu0
  %1881 = vmatprep.mubr.f32.mxu0 0.0
  %1882 = vmatmul.mubr.f32.gmra.mxu0 %v1397
  %v1883 = vpop.f32.mrf.mxu0
  %v1884 = vadd.f32 %v1639, %v1883
  %v1885 = vpop.f32.mrf.mxu0
  %1886 = vmatprep.mubr.f32.mxu0 0.0
  %1887 = vmatmul.mubr.f32.gmra.mxu0 %v1400
  %v1888 = vpop.f32.mrf.mxu0
  %v1889 = vadd.f32 %v1644, %v1888
  %v1890 = vpop.f32.mrf.mxu0
  %1891 = vdwg.mxu0
  %s1892 = scalar_lea.vmem %s4, 8
  %v1893 = vld [vmem:[%s1892] sm:$0xff]
  %vm1894 = vcmask 64512
  %v1896 = vsel %vm1894, %v1714, 0
  %v1899 = vsel %vm1894, %v1719, 0
  %v1902 = vsel %vm1894, %v1724, 0
  %v1905 = vsel %vm1894, %v1729, 0
  %v1908 = vsel %vm1894, %v1734, 0
  %v1911 = vsel %vm1894, %v1739, 0
  %v1914 = vsel %vm1894, %v1744, 0
  %v1917 = vsel %vm1894, %v1749, 0
  %v1920 = vsel %vm1894, %v1754, 0
  %v1923 = vsel %vm1894, %v1759, 0
  %v1926 = vsel %vm1894, %v1764, 0
  %v1929 = vsel %vm1894, %v1769, 0
  %v1932 = vsel %vm1894, %v1774, 0
  %v1935 = vsel %vm1894, %v1779, 0
  %v1938 = vsel %vm1894, %v1784, 0
  %v1941 = vsel %vm1894, %v1789, 0
  %v1944 = vsel %vm1894, %v1794, 0
  %v1947 = vsel %vm1894, %v1799, 0
  %v1950 = vsel %vm1894, %v1804, 0
  %v1953 = vsel %vm1894, %v1809, 0
  %v1956 = vsel %vm1894, %v1814, 0
  %v1959 = vsel %vm1894, %v1819, 0
  %v1962 = vsel %vm1894, %v1824, 0
  %v1965 = vsel %vm1894, %v1829, 0
  %v1968 = vsel %vm1894, %v1834, 0
  %v1971 = vsel %vm1894, %v1839, 0
  %v1974 = vsel %vm1894, %v1844, 0
  %v1977 = vsel %vm1894, %v1849, 0
  %v1980 = vsel %vm1894, %v1854, 0
  %v1983 = vsel %vm1894, %v1859, 0
  %v1986 = vsel %vm1894, %v1864, 0
  %v1989 = vsel %vm1894, %v1869, 0
  %v1992 = vsel %vm1894, %v1874, 0
  %v1995 = vsel %vm1894, %v1879, 0
  %v1998 = vsel %vm1894, %v1884, 0
  %v2001 = vsel %vm1894, %v1889, 0
  %2003 = vmatprep.subr.mxu0 0.0
  %2004 = vmatpush1.msra.mxu0 0.0
  %2005 = vmatprep.subr.mxu0 0.0
  %2006 = vmatpush1.msra.mxu0 0.0
  %2007 = vmatprep.subr.mxu0 0.0
  %2008 = vmatpush1.msra.mxu0 0.0
  %2009 = vmatprep.subr.mxu0 0.0
  %2010 = vmatpush1.msra.mxu0 0.0
  %2011 = vmatprep.subr.mxu0 0.0
  %2012 = vmatpush1.msra.mxu0 0.0
  %2013 = vmatprep.subr.mxu0 0.0
  %2014 = vmatpush1.msra.mxu0 0.0
  %2015 = vmatprep.subr.mxu0 0.0
  %2016 = vmatpush1.msra.mxu0 0.0
  %2017 = vmatprep.subr.mxu0 0.0
  %2018 = vmatpush1.msra.mxu0 0.0
  %2019 = vmatprep.subr.mxu0 0.0
  %2020 = vmatpush1.msra.mxu0 0.0
  %2021 = vmatprep.subr.mxu0 0.0
  %2022 = vmatpush1.msra.mxu0 0.0
  %2023 = vmatprep.subr.mxu0 0.0
  %2024 = vmatpush1.msra.mxu0 0.0
  %2025 = vmatprep.subr.mxu0 0.0
  %2026 = vmatpush1.msra.mxu0 0.0
  %2027 = vmatprep.subr.mxu0 0.0
  %2028 = vmatpush1.msra.mxu0 0.0
  %2029 = vmatprep.subr.mxu0 0.0
  %2030 = vmatpush1.msra.mxu0 0.0
  %2031 = vmatprep.subr.mxu0 0.0
  %2032 = vmatpush1.msra.mxu0 0.0
  %2033 = vmatprep.subr.mxu0 0.0
  %2034 = vmatpush1.msra.mxu0 %v1893
  %2035 = vmatprep.subr.mxu0 0.0
  %2036 = vmatpush2.msra.mxu0 0.0
  %2037 = vmatprep.subr.mxu0 0.0
  %2038 = vmatpush2.msra.mxu0 0.0
  %2039 = vmatprep.subr.mxu0 0.0
  %2040 = vmatpush2.msra.mxu0 0.0
  %2041 = vmatprep.subr.mxu0 0.0
  %2042 = vmatpush2.msra.mxu0 0.0
  %2043 = vmatprep.subr.mxu0 0.0
  %2044 = vmatpush2.msra.mxu0 0.0
  %2045 = vmatprep.subr.mxu0 0.0
  %2046 = vmatpush2.msra.mxu0 0.0
  %2047 = vmatprep.subr.mxu0 0.0
  %2048 = vmatpush2.msra.mxu0 0.0
  %2049 = vmatprep.subr.mxu0 0.0
  %2050 = vmatpush2.msra.mxu0 0.0
  %2051 = vmatprep.subr.mxu0 0.0
  %2052 = vmatpush2.msra.mxu0 0.0
  %2053 = vmatprep.subr.mxu0 0.0
  %2054 = vmatpush2.msra.mxu0 0.0
  %2055 = vmatprep.subr.mxu0 0.0
  %2056 = vmatpush2.msra.mxu0 0.0
  %2057 = vmatprep.subr.mxu0 0.0
  %2058 = vmatpush2.msra.mxu0 0.0
  %2059 = vmatprep.subr.mxu0 0.0
  %2060 = vmatpush2.msra.mxu0 0.0
  %2061 = vmatprep.subr.mxu0 0.0
  %2062 = vmatpush2.msra.mxu0 0.0
  %2063 = vmatprep.subr.mxu0 0.0
  %2064 = vmatpush2.msra.mxu0 0.0
  %2065 = vmatprep.subr.mxu0 0.0
  %2066 = vmatpush2.msra.mxu0 0.0
  %2067 = vmatprep.mubr.f32.mxu0 0.0
  %2068 = vmatmul.mubr.f32.gmra.mxu0 %v1896
  %v2069 = vpop.f32.mrf.mxu0
  %v2070 = vadd.f32 0.0, %v2069
  %v2071 = vpop.f32.mrf.mxu0
  %2072 = vmatprep.mubr.f32.mxu0 0.0
  %2073 = vmatmul.mubr.f32.gmra.mxu0 %v1899
  %v2074 = vpop.f32.mrf.mxu0
  %v2075 = vadd.f32 0.0, %v2074
  %v2076 = vpop.f32.mrf.mxu0
  %2077 = vmatprep.mubr.f32.mxu0 0.0
  %2078 = vmatmul.mubr.f32.gmra.mxu0 %v1902
  %v2079 = vpop.f32.mrf.mxu0
  %v2080 = vadd.f32 0.0, %v2079
  %v2081 = vpop.f32.mrf.mxu0
  %2082 = vmatprep.mubr.f32.mxu0 0.0
  %2083 = vmatmul.mubr.f32.gmra.mxu0 %v1905
  %v2084 = vpop.f32.mrf.mxu0
  %v2085 = vadd.f32 0.0, %v2084
  %v2086 = vpop.f32.mrf.mxu0
  %2087 = vmatprep.mubr.f32.mxu0 0.0
  %2088 = vmatmul.mubr.f32.gmra.mxu0 %v1908
  %v2089 = vpop.f32.mrf.mxu0
  %v2090 = vadd.f32 0.0, %v2089
  %v2091 = vpop.f32.mrf.mxu0
  %2092 = vmatprep.mubr.f32.mxu0 0.0
  %2093 = vmatmul.mubr.f32.gmra.mxu0 %v1911
  %v2094 = vpop.f32.mrf.mxu0
  %v2095 = vadd.f32 0.0, %v2094
  %v2096 = vpop.f32.mrf.mxu0
  %2097 = vmatprep.mubr.f32.mxu0 0.0
  %2098 = vmatmul.mubr.f32.gmra.mxu0 %v1914
  %v2099 = vpop.f32.mrf.mxu0
  %v2100 = vadd.f32 0.0, %v2099
  %v2101 = vpop.f32.mrf.mxu0
  %2102 = vmatprep.mubr.f32.mxu0 0.0
  %2103 = vmatmul.mubr.f32.gmra.mxu0 %v1917
  %v2104 = vpop.f32.mrf.mxu0
  %v2105 = vadd.f32 0.0, %v2104
  %v2106 = vpop.f32.mrf.mxu0
  %2107 = vmatprep.mubr.f32.mxu0 0.0
  %2108 = vmatmul.mubr.f32.gmra.mxu0 %v1920
  %v2109 = vpop.f32.mrf.mxu0
  %v2110 = vadd.f32 0.0, %v2109
  %v2111 = vpop.f32.mrf.mxu0
  %2112 = vmatprep.mubr.f32.mxu0 0.0
  %2113 = vmatmul.mubr.f32.gmra.mxu0 %v1923
  %v2114 = vpop.f32.mrf.mxu0
  %v2115 = vadd.f32 0.0, %v2114
  %v2116 = vpop.f32.mrf.mxu0
  %2117 = vmatprep.mubr.f32.mxu0 0.0
  %2118 = vmatmul.mubr.f32.gmra.mxu0 %v1926
  %v2119 = vpop.f32.mrf.mxu0
  %v2120 = vadd.f32 0.0, %v2119
  %v2121 = vpop.f32.mrf.mxu0
  %2122 = vmatprep.mubr.f32.mxu0 0.0
  %2123 = vmatmul.mubr.f32.gmra.mxu0 %v1929
  %v2124 = vpop.f32.mrf.mxu0
  %v2125 = vadd.f32 0.0, %v2124
  %v2126 = vpop.f32.mrf.mxu0
  %2127 = vmatprep.mubr.f32.mxu0 0.0
  %2128 = vmatmul.mubr.f32.gmra.mxu0 %v1932
  %v2129 = vpop.f32.mrf.mxu0
  %v2130 = vadd.f32 0.0, %v2129
  %v2131 = vpop.f32.mrf.mxu0
  %2132 = vmatprep.mubr.f32.mxu0 0.0
  %2133 = vmatmul.mubr.f32.gmra.mxu0 %v1935
  %v2134 = vpop.f32.mrf.mxu0
  %v2135 = vadd.f32 0.0, %v2134
  %v2136 = vpop.f32.mrf.mxu0
  %2137 = vmatprep.mubr.f32.mxu0 0.0
  %2138 = vmatmul.mubr.f32.gmra.mxu0 %v1938
  %v2139 = vpop.f32.mrf.mxu0
  %v2140 = vadd.f32 0.0, %v2139
  %v2141 = vpop.f32.mrf.mxu0
  %2142 = vmatprep.mubr.f32.mxu0 0.0
  %2143 = vmatmul.mubr.f32.gmra.mxu0 %v1941
  %v2144 = vpop.f32.mrf.mxu0
  %v2145 = vadd.f32 0.0, %v2144
  %v2146 = vpop.f32.mrf.mxu0
  %2147 = vmatprep.mubr.f32.mxu0 0.0
  %2148 = vmatmul.mubr.f32.gmra.mxu0 %v1944
  %v2149 = vpop.f32.mrf.mxu0
  %v2150 = vadd.f32 0.0, %v2149
  %v2151 = vpop.f32.mrf.mxu0
  %2152 = vmatprep.mubr.f32.mxu0 0.0
  %2153 = vmatmul.mubr.f32.gmra.mxu0 %v1947
  %v2154 = vpop.f32.mrf.mxu0
  %v2155 = vadd.f32 0.0, %v2154
  %v2156 = vpop.f32.mrf.mxu0
  %2157 = vmatprep.mubr.f32.mxu0 0.0
  %2158 = vmatmul.mubr.f32.gmra.mxu0 %v1950
  %v2159 = vpop.f32.mrf.mxu0
  %v2160 = vadd.f32 0.0, %v2159
  %v2161 = vpop.f32.mrf.mxu0
  %2162 = vmatprep.mubr.f32.mxu0 0.0
  %2163 = vmatmul.mubr.f32.gmra.mxu0 %v1953
  %v2164 = vpop.f32.mrf.mxu0
  %v2165 = vadd.f32 0.0, %v2164
  %v2166 = vpop.f32.mrf.mxu0
  %2167 = vmatprep.mubr.f32.mxu0 0.0
  %2168 = vmatmul.mubr.f32.gmra.mxu0 %v1956
  %v2169 = vpop.f32.mrf.mxu0
  %v2170 = vadd.f32 0.0, %v2169
  %v2171 = vpop.f32.mrf.mxu0
  %2172 = vmatprep.mubr.f32.mxu0 0.0
  %2173 = vmatmul.mubr.f32.gmra.mxu0 %v1959
  %v2174 = vpop.f32.mrf.mxu0
  %v2175 = vadd.f32 0.0, %v2174
  %v2176 = vpop.f32.mrf.mxu0
  %2177 = vmatprep.mubr.f32.mxu0 0.0
  %2178 = vmatmul.mubr.f32.gmra.mxu0 %v1962
  %v2179 = vpop.f32.mrf.mxu0
  %v2180 = vadd.f32 0.0, %v2179
  %v2181 = vpop.f32.mrf.mxu0
  %2182 = vmatprep.mubr.f32.mxu0 0.0
  %2183 = vmatmul.mubr.f32.gmra.mxu0 %v1965
  %v2184 = vpop.f32.mrf.mxu0
  %v2185 = vadd.f32 0.0, %v2184
  %v2186 = vpop.f32.mrf.mxu0
  %2187 = vmatprep.mubr.f32.mxu0 0.0
  %2188 = vmatmul.mubr.f32.gmra.mxu0 %v1968
  %v2189 = vpop.f32.mrf.mxu0
  %v2190 = vadd.f32 0.0, %v2189
  %v2191 = vpop.f32.mrf.mxu0
  %2192 = vmatprep.mubr.f32.mxu0 0.0
  %2193 = vmatmul.mubr.f32.gmra.mxu0 %v1971
  %v2194 = vpop.f32.mrf.mxu0
  %v2195 = vadd.f32 0.0, %v2194
  %v2196 = vpop.f32.mrf.mxu0
  %2197 = vmatprep.mubr.f32.mxu0 0.0
  %2198 = vmatmul.mubr.f32.gmra.mxu0 %v1974
  %v2199 = vpop.f32.mrf.mxu0
  %v2200 = vadd.f32 0.0, %v2199
  %v2201 = vpop.f32.mrf.mxu0
  %2202 = vmatprep.mubr.f32.mxu0 0.0
  %2203 = vmatmul.mubr.f32.gmra.mxu0 %v1977
  %v2204 = vpop.f32.mrf.mxu0
  %v2205 = vadd.f32 0.0, %v2204
  %v2206 = vpop.f32.mrf.mxu0
  %2207 = vmatprep.mubr.f32.mxu0 0.0
  %2208 = vmatmul.mubr.f32.gmra.mxu0 %v1980
  %v2209 = vpop.f32.mrf.mxu0
  %v2210 = vadd.f32 0.0, %v2209
  %v2211 = vpop.f32.mrf.mxu0
  %2212 = vmatprep.mubr.f32.mxu0 0.0
  %2213 = vmatmul.mubr.f32.gmra.mxu0 %v1983
  %v2214 = vpop.f32.mrf.mxu0
  %v2215 = vadd.f32 0.0, %v2214
  %v2216 = vpop.f32.mrf.mxu0
  %2217 = vmatprep.mubr.f32.mxu0 0.0
  %2218 = vmatmul.mubr.f32.gmra.mxu0 %v1986
  %v2219 = vpop.f32.mrf.mxu0
  %v2220 = vadd.f32 0.0, %v2219
  %v2221 = vpop.f32.mrf.mxu0
  %2222 = vmatprep.mubr.f32.mxu0 0.0
  %2223 = vmatmul.mubr.f32.gmra.mxu0 %v1989
  %v2224 = vpop.f32.mrf.mxu0
  %v2225 = vadd.f32 0.0, %v2224
  %v2226 = vpop.f32.mrf.mxu0
  %2227 = vmatprep.mubr.f32.mxu0 0.0
  %2228 = vmatmul.mubr.f32.gmra.mxu0 %v1992
  %v2229 = vpop.f32.mrf.mxu0
  %v2230 = vadd.f32 0.0, %v2229
  %v2231 = vpop.f32.mrf.mxu0
  %2232 = vmatprep.mubr.f32.mxu0 0.0
  %2233 = vmatmul.mubr.f32.gmra.mxu0 %v1995
  %v2234 = vpop.f32.mrf.mxu0
  %v2235 = vadd.f32 0.0, %v2234
  %v2236 = vpop.f32.mrf.mxu0
  %2237 = vmatprep.mubr.f32.mxu0 0.0
  %2238 = vmatmul.mubr.f32.gmra.mxu0 %v1998
  %v2239 = vpop.f32.mrf.mxu0
  %v2240 = vadd.f32 0.0, %v2239
  %v2241 = vpop.f32.mrf.mxu0
  %2242 = vmatprep.mubr.f32.mxu0 0.0
  %2243 = vmatmul.mubr.f32.gmra.mxu0 %v2001
  %v2244 = vpop.f32.mrf.mxu0
  %v2245 = vadd.f32 0.0, %v2244
  %v2246 = vpop.f32.mrf.mxu0
  %2247 = vdwg.mxu0
  %v2249 = vsel %vm1894, %v1006, 0
  %v2252 = vsel %vm1894, %v1011, 0
  %v2255 = vsel %vm1894, %v1016, 0
  %v2258 = vsel %vm1894, %v1021, 0
  %v2261 = vsel %vm1894, %v1026, 0
  %v2264 = vsel %vm1894, %v1031, 0
  %v2267 = vsel %vm1894, %v1036, 0
  %v2270 = vsel %vm1894, %v1041, 0
  %v2273 = vsel %vm1894, %v1046, 0
  %v2276 = vsel %vm1894, %v1051, 0
  %v2279 = vsel %vm1894, %v1056, 0
  %v2282 = vsel %vm1894, %v1061, 0
  %v2285 = vsel %vm1894, %v1066, 0
  %v2288 = vsel %vm1894, %v1071, 0
  %v2291 = vsel %vm1894, %v1076, 0
  %v2294 = vsel %vm1894, %v1081, 0
  %v2297 = vsel %vm1894, %v1086, 0
  %v2300 = vsel %vm1894, %v1091, 0
  %v2303 = vsel %vm1894, %v1096, 0
  %v2306 = vsel %vm1894, %v1101, 0
  %v2309 = vsel %vm1894, %v1106, 0
  %v2312 = vsel %vm1894, %v1111, 0
  %v2315 = vsel %vm1894, %v1116, 0
  %v2318 = vsel %vm1894, %v1121, 0
  %v2321 = vsel %vm1894, %v1126, 0
  %v2324 = vsel %vm1894, %v1131, 0
  %v2327 = vsel %vm1894, %v1136, 0
  %v2330 = vsel %vm1894, %v1141, 0
  %v2333 = vsel %vm1894, %v1146, 0
  %v2336 = vsel %vm1894, %v1151, 0
  %v2339 = vsel %vm1894, %v1156, 0
  %v2342 = vsel %vm1894, %v1161, 0
  %v2345 = vsel %vm1894, %v1166, 0
  %v2348 = vsel %vm1894, %v1171, 0
  %v2351 = vsel %vm1894, %v1176, 0
  %v2354 = vsel %vm1894, %v1181, 0
  %2356 = vmatprep.subr.mxu0 0.0
  %2357 = vmatpush1.msra.mxu0 0.0
  %2358 = vmatprep.subr.mxu0 0.0
  %2359 = vmatpush1.msra.mxu0 0.0
  %2360 = vmatprep.subr.mxu0 0.0
  %2361 = vmatpush1.msra.mxu0 0.0
  %2362 = vmatprep.subr.mxu0 0.0
  %2363 = vmatpush1.msra.mxu0 0.0
  %2364 = vmatprep.subr.mxu0 0.0
  %2365 = vmatpush1.msra.mxu0 0.0
  %2366 = vmatprep.subr.mxu0 0.0
  %2367 = vmatpush1.msra.mxu0 0.0
  %2368 = vmatprep.subr.mxu0 0.0
  %2369 = vmatpush1.msra.mxu0 0.0
  %2370 = vmatprep.subr.mxu0 0.0
  %2371 = vmatpush1.msra.mxu0 0.0
  %2372 = vmatprep.subr.mxu0 0.0
  %2373 = vmatpush1.msra.mxu0 0.0
  %2374 = vmatprep.subr.mxu0 0.0
  %2375 = vmatpush1.msra.mxu0 0.0
  %2376 = vmatprep.subr.mxu0 0.0
  %2377 = vmatpush1.msra.mxu0 0.0
  %2378 = vmatprep.subr.mxu0 0.0
  %2379 = vmatpush1.msra.mxu0 0.0
  %2380 = vmatprep.subr.mxu0 0.0
  %2381 = vmatpush1.msra.mxu0 0.0
  %2382 = vmatprep.subr.mxu0 0.0
  %2383 = vmatpush1.msra.mxu0 0.0
  %2384 = vmatprep.subr.mxu0 0.0
  %2385 = vmatpush1.msra.mxu0 0.0
  %2386 = vmatprep.subr.mxu0 0.0
  %2387 = vmatpush1.msra.mxu0 %v1184
  %2388 = vmatprep.subr.mxu0 0.0
  %2389 = vmatpush2.msra.mxu0 0.0
  %2390 = vmatprep.subr.mxu0 0.0
  %2391 = vmatpush2.msra.mxu0 0.0
  %2392 = vmatprep.subr.mxu0 0.0
  %2393 = vmatpush2.msra.mxu0 0.0
  %2394 = vmatprep.subr.mxu0 0.0
  %2395 = vmatpush2.msra.mxu0 0.0
  %2396 = vmatprep.subr.mxu0 0.0
  %2397 = vmatpush2.msra.mxu0 0.0
  %2398 = vmatprep.subr.mxu0 0.0
  %2399 = vmatpush2.msra.mxu0 0.0
  %2400 = vmatprep.subr.mxu0 0.0
  %2401 = vmatpush2.msra.mxu0 0.0
  %2402 = vmatprep.subr.mxu0 0.0
  %2403 = vmatpush2.msra.mxu0 0.0
  %2404 = vmatprep.subr.mxu0 0.0
  %2405 = vmatpush2.msra.mxu0 0.0
  %2406 = vmatprep.subr.mxu0 0.0
  %2407 = vmatpush2.msra.mxu0 0.0
  %2408 = vmatprep.subr.mxu0 0.0
  %2409 = vmatpush2.msra.mxu0 0.0
  %2410 = vmatprep.subr.mxu0 0.0
  %2411 = vmatpush2.msra.mxu0 0.0
  %2412 = vmatprep.subr.mxu0 0.0
  %2413 = vmatpush2.msra.mxu0 0.0
  %2414 = vmatprep.subr.mxu0 0.0
  %2415 = vmatpush2.msra.mxu0 0.0
  %2416 = vmatprep.subr.mxu0 0.0
  %2417 = vmatpush2.msra.mxu0 0.0
  %2418 = vmatprep.subr.mxu0 0.0
  %2419 = vmatpush2.msra.mxu0 0.0
  %2420 = vmatprep.mubr.f32.mxu0 0.0
  %2421 = vmatmul.mubr.f32.gmra.mxu0 %v2249
  %v2422 = vpop.f32.mrf.mxu0
  %v2423 = vadd.f32 %v2070, %v2422
  %v2424 = vpop.f32.mrf.mxu0
  %2425 = vmatprep.mubr.f32.mxu0 0.0
  %2426 = vmatmul.mubr.f32.gmra.mxu0 %v2252
  %v2427 = vpop.f32.mrf.mxu0
  %v2428 = vadd.f32 %v2075, %v2427
  %v2429 = vpop.f32.mrf.mxu0
  %2430 = vmatprep.mubr.f32.mxu0 0.0
  %2431 = vmatmul.mubr.f32.gmra.mxu0 %v2255
  %v2432 = vpop.f32.mrf.mxu0
  %v2433 = vadd.f32 %v2080, %v2432
  %v2434 = vpop.f32.mrf.mxu0
  %2435 = vmatprep.mubr.f32.mxu0 0.0
  %2436 = vmatmul.mubr.f32.gmra.mxu0 %v2258
  %v2437 = vpop.f32.mrf.mxu0
  %v2438 = vadd.f32 %v2085, %v2437
  %v2439 = vpop.f32.mrf.mxu0
  %2440 = vmatprep.mubr.f32.mxu0 0.0
  %2441 = vmatmul.mubr.f32.gmra.mxu0 %v2261
  %v2442 = vpop.f32.mrf.mxu0
  %v2443 = vadd.f32 %v2090, %v2442
  %v2444 = vpop.f32.mrf.mxu0
  %2445 = vmatprep.mubr.f32.mxu0 0.0
  %2446 = vmatmul.mubr.f32.gmra.mxu0 %v2264
  %v2447 = vpop.f32.mrf.mxu0
  %v2448 = vadd.f32 %v2095, %v2447
  %v2449 = vpop.f32.mrf.mxu0
  %2450 = vmatprep.mubr.f32.mxu0 0.0
  %2451 = vmatmul.mubr.f32.gmra.mxu0 %v2267
  %v2452 = vpop.f32.mrf.mxu0
  %v2453 = vadd.f32 %v2100, %v2452
  %v2454 = vpop.f32.mrf.mxu0
  %2455 = vmatprep.mubr.f32.mxu0 0.0
  %2456 = vmatmul.mubr.f32.gmra.mxu0 %v2270
  %v2457 = vpop.f32.mrf.mxu0
  %v2458 = vadd.f32 %v2105, %v2457
  %v2459 = vpop.f32.mrf.mxu0
  %2460 = vmatprep.mubr.f32.mxu0 0.0
  %2461 = vmatmul.mubr.f32.gmra.mxu0 %v2273
  %v2462 = vpop.f32.mrf.mxu0
  %v2463 = vadd.f32 %v2110, %v2462
  %v2464 = vpop.f32.mrf.mxu0
  %2465 = vmatprep.mubr.f32.mxu0 0.0
  %2466 = vmatmul.mubr.f32.gmra.mxu0 %v2276
  %v2467 = vpop.f32.mrf.mxu0
  %v2468 = vadd.f32 %v2115, %v2467
  %v2469 = vpop.f32.mrf.mxu0
  %2470 = vmatprep.mubr.f32.mxu0 0.0
  %2471 = vmatmul.mubr.f32.gmra.mxu0 %v2279
  %v2472 = vpop.f32.mrf.mxu0
  %v2473 = vadd.f32 %v2120, %v2472
  %v2474 = vpop.f32.mrf.mxu0
  %2475 = vmatprep.mubr.f32.mxu0 0.0
  %2476 = vmatmul.mubr.f32.gmra.mxu0 %v2282
  %v2477 = vpop.f32.mrf.mxu0
  %v2478 = vadd.f32 %v2125, %v2477
  %v2479 = vpop.f32.mrf.mxu0
  %2480 = vmatprep.mubr.f32.mxu0 0.0
  %2481 = vmatmul.mubr.f32.gmra.mxu0 %v2285
  %v2482 = vpop.f32.mrf.mxu0
  %v2483 = vadd.f32 %v2130, %v2482
  %v2484 = vpop.f32.mrf.mxu0
  %2485 = vmatprep.mubr.f32.mxu0 0.0
  %2486 = vmatmul.mubr.f32.gmra.mxu0 %v2288
  %v2487 = vpop.f32.mrf.mxu0
  %v2488 = vadd.f32 %v2135, %v2487
  %v2489 = vpop.f32.mrf.mxu0
  %2490 = vmatprep.mubr.f32.mxu0 0.0
  %2491 = vmatmul.mubr.f32.gmra.mxu0 %v2291
  %v2492 = vpop.f32.mrf.mxu0
  %v2493 = vadd.f32 %v2140, %v2492
  %v2494 = vpop.f32.mrf.mxu0
  %2495 = vmatprep.mubr.f32.mxu0 0.0
  %2496 = vmatmul.mubr.f32.gmra.mxu0 %v2294
  %v2497 = vpop.f32.mrf.mxu0
  %v2498 = vadd.f32 %v2145, %v2497
  %v2499 = vpop.f32.mrf.mxu0
  %2500 = vmatprep.mubr.f32.mxu0 0.0
  %2501 = vmatmul.mubr.f32.gmra.mxu0 %v2297
  %v2502 = vpop.f32.mrf.mxu0
  %v2503 = vadd.f32 %v2150, %v2502
  %v2504 = vpop.f32.mrf.mxu0
  %2505 = vmatprep.mubr.f32.mxu0 0.0
  %2506 = vmatmul.mubr.f32.gmra.mxu0 %v2300
  %v2507 = vpop.f32.mrf.mxu0
  %v2508 = vadd.f32 %v2155, %v2507
  %v2509 = vpop.f32.mrf.mxu0
  %2510 = vmatprep.mubr.f32.mxu0 0.0
  %2511 = vmatmul.mubr.f32.gmra.mxu0 %v2303
  %v2512 = vpop.f32.mrf.mxu0
  %v2513 = vadd.f32 %v2160, %v2512
  %v2514 = vpop.f32.mrf.mxu0
  %2515 = vmatprep.mubr.f32.mxu0 0.0
  %2516 = vmatmul.mubr.f32.gmra.mxu0 %v2306
  %v2517 = vpop.f32.mrf.mxu0
  %v2518 = vadd.f32 %v2165, %v2517
  %v2519 = vpop.f32.mrf.mxu0
  %2520 = vmatprep.mubr.f32.mxu0 0.0
  %2521 = vmatmul.mubr.f32.gmra.mxu0 %v2309
  %v2522 = vpop.f32.mrf.mxu0
  %v2523 = vadd.f32 %v2170, %v2522
  %v2524 = vpop.f32.mrf.mxu0
  %2525 = vmatprep.mubr.f32.mxu0 0.0
  %2526 = vmatmul.mubr.f32.gmra.mxu0 %v2312
  %v2527 = vpop.f32.mrf.mxu0
  %v2528 = vadd.f32 %v2175, %v2527
  %v2529 = vpop.f32.mrf.mxu0
  %2530 = vmatprep.mubr.f32.mxu0 0.0
  %2531 = vmatmul.mubr.f32.gmra.mxu0 %v2315
  %v2532 = vpop.f32.mrf.mxu0
  %v2533 = vadd.f32 %v2180, %v2532
  %v2534 = vpop.f32.mrf.mxu0
  %2535 = vmatprep.mubr.f32.mxu0 0.0
  %2536 = vmatmul.mubr.f32.gmra.mxu0 %v2318
  %v2537 = vpop.f32.mrf.mxu0
  %v2538 = vadd.f32 %v2185, %v2537
  %v2539 = vpop.f32.mrf.mxu0
  %2540 = vmatprep.mubr.f32.mxu0 0.0
  %2541 = vmatmul.mubr.f32.gmra.mxu0 %v2321
  %v2542 = vpop.f32.mrf.mxu0
  %v2543 = vadd.f32 %v2190, %v2542
  %v2544 = vpop.f32.mrf.mxu0
  %2545 = vmatprep.mubr.f32.mxu0 0.0
  %2546 = vmatmul.mubr.f32.gmra.mxu0 %v2324
  %v2547 = vpop.f32.mrf.mxu0
  %v2548 = vadd.f32 %v2195, %v2547
  %v2549 = vpop.f32.mrf.mxu0
  %2550 = vmatprep.mubr.f32.mxu0 0.0
  %2551 = vmatmul.mubr.f32.gmra.mxu0 %v2327
  %v2552 = vpop.f32.mrf.mxu0
  %v2553 = vadd.f32 %v2200, %v2552
  %v2554 = vpop.f32.mrf.mxu0
  %2555 = vmatprep.mubr.f32.mxu0 0.0
  %2556 = vmatmul.mubr.f32.gmra.mxu0 %v2330
  %v2557 = vpop.f32.mrf.mxu0
  %v2558 = vadd.f32 %v2205, %v2557
  %v2559 = vpop.f32.mrf.mxu0
  %2560 = vmatprep.mubr.f32.mxu0 0.0
  %2561 = vmatmul.mubr.f32.gmra.mxu0 %v2333
  %v2562 = vpop.f32.mrf.mxu0
  %v2563 = vadd.f32 %v2210, %v2562
  %v2564 = vpop.f32.mrf.mxu0
  %2565 = vmatprep.mubr.f32.mxu0 0.0
  %2566 = vmatmul.mubr.f32.gmra.mxu0 %v2336
  %v2567 = vpop.f32.mrf.mxu0
  %v2568 = vadd.f32 %v2215, %v2567
  %v2569 = vpop.f32.mrf.mxu0
  %2570 = vmatprep.mubr.f32.mxu0 0.0
  %2571 = vmatmul.mubr.f32.gmra.mxu0 %v2339
  %v2572 = vpop.f32.mrf.mxu0
  %v2573 = vadd.f32 %v2220, %v2572
  %v2574 = vpop.f32.mrf.mxu0
  %2575 = vmatprep.mubr.f32.mxu0 0.0
  %2576 = vmatmul.mubr.f32.gmra.mxu0 %v2342
  %v2577 = vpop.f32.mrf.mxu0
  %v2578 = vadd.f32 %v2225, %v2577
  %v2579 = vpop.f32.mrf.mxu0
  %2580 = vmatprep.mubr.f32.mxu0 0.0
  %2581 = vmatmul.mubr.f32.gmra.mxu0 %v2345
  %v2582 = vpop.f32.mrf.mxu0
  %v2583 = vadd.f32 %v2230, %v2582
  %v2584 = vpop.f32.mrf.mxu0
  %2585 = vmatprep.mubr.f32.mxu0 0.0
  %2586 = vmatmul.mubr.f32.gmra.mxu0 %v2348
  %v2587 = vpop.f32.mrf.mxu0
  %v2588 = vadd.f32 %v2235, %v2587
  %v2589 = vpop.f32.mrf.mxu0
  %2590 = vmatprep.mubr.f32.mxu0 0.0
  %2591 = vmatmul.mubr.f32.gmra.mxu0 %v2351
  %v2592 = vpop.f32.mrf.mxu0
  %v2593 = vadd.f32 %v2240, %v2592
  %v2594 = vpop.f32.mrf.mxu0
  %2595 = vmatprep.mubr.f32.mxu0 0.0
  %2596 = vmatmul.mubr.f32.gmra.mxu0 %v2354
  %v2597 = vpop.f32.mrf.mxu0
  %v2598 = vadd.f32 %v2245, %v2597
  %v2599 = vpop.f32.mrf.mxu0
  %2600 = vdwg.mxu0
  %s2601 = scalar_lea.vmem %s3, 1728
  %v2602 = vld [vmem:[%s2601] sm:$0xff]
  %v2603 = vld [vmem:[%s2601 + $0x8] sm:$0xff]
  %v2604 = vld [vmem:[%s2601 + $0x10] sm:$0xff]
  %v2605 = vld [vmem:[%s2601 + $0x18] sm:$0xff]
  %v2606 = vld [vmem:[%s2601 + $0x20] sm:$0xff]
  %v2607 = vld [vmem:[%s2601 + $0x28] sm:$0xff]
  %v2608 = vld [vmem:[%s2601 + $0x30] sm:$0xff]
  %v2609 = vld [vmem:[%s2601 + $0x38] sm:$0xff]
  %v2610 = vld [vmem:[%s2601 + $0x40] sm:$0xff]
  %v2611 = vld [vmem:[%s2601 + $0x48] sm:$0xff]
  %v2612 = vld [vmem:[%s2601 + $0x50] sm:$0xff]
  %v2613 = vld [vmem:[%s2601 + $0x58] sm:$0xff]
  %v2614 = vld [vmem:[%s2601 + $0x60] sm:$0xff]
  %v2615 = vld [vmem:[%s2601 + $0x68] sm:$0xff]
  %v2616 = vld [vmem:[%s2601 + $0x70] sm:$0xff]
  %v2617 = vld [vmem:[%s2601 + $0x78] sm:$0xff]
  %v2618 = vld [vmem:[%s2601 + $0x80] sm:$0xff]
  %v2619 = vld [vmem:[%s2601 + $0x88] sm:$0xff]
  %v2620 = vld [vmem:[%s2601 + $0x90] sm:$0xff]
  %v2621 = vld [vmem:[%s2601 + $0x98] sm:$0xff]
  %v2622 = vld [vmem:[%s2601 + $0xa0] sm:$0xff]
  %v2623 = vld [vmem:[%s2601 + $0xa8] sm:$0xff]
  %v2624 = vld [vmem:[%s2601 + $0xb0] sm:$0xff]
  %v2625 = vld [vmem:[%s2601 + $0xb8] sm:$0xff]
  %v2626 = vld [vmem:[%s2601 + $0xc0] sm:$0xff]
  %v2627 = vld [vmem:[%s2601 + $0xc8] sm:$0xff]
  %v2628 = vld [vmem:[%s2601 + $0xd0] sm:$0xff]
  %v2629 = vld [vmem:[%s2601 + $0xd8] sm:$0xff]
  %v2630 = vld [vmem:[%s2601 + $0xe0] sm:$0xff]
  %v2631 = vld [vmem:[%s2601 + $0xe8] sm:$0xff]
  %v2632 = vld [vmem:[%s2601 + $0xf0] sm:$0xff]
  %v2633 = vld [vmem:[%s2601 + $0xf8] sm:$0xff]
  %v2634 = vld [vmem:[%s2601 + $0x100] sm:$0xff]
  %v2635 = vld [vmem:[%s2601 + $0x108] sm:$0xff]
  %v2636 = vld [vmem:[%s2601 + $0x110] sm:$0xff]
  %v2637 = vld [vmem:[%s2601 + $0x118] sm:$0xff]
  %v2638 = vld [vmem:[%s2601 + $0x120] sm:$0xff]
  %v2639 = vld [vmem:[%s2601 + $0x128] sm:$0xff]
  %v2640 = vld [vmem:[%s2601 + $0x130] sm:$0xff]
  %v2641 = vld [vmem:[%s2601 + $0x138] sm:$0xff]
  %v2642 = vld [vmem:[%s2601 + $0x140] sm:$0xff]
  %v2643 = vld [vmem:[%s2601 + $0x148] sm:$0xff]
  %v2644 = vld [vmem:[%s2601 + $0x150] sm:$0xff]
  %v2645 = vld [vmem:[%s2601 + $0x158] sm:$0xff]
  %v2646 = vld [vmem:[%s2601 + $0x160] sm:$0xff]
  %v2647 = vld [vmem:[%s2601 + $0x168] sm:$0xff]
  %v2648 = vld [vmem:[%s2601 + $0x170] sm:$0xff]
  %v2649 = vld [vmem:[%s2601 + $0x178] sm:$0xff]
  %v2650 = vld [vmem:[%s2601 + $0x180] sm:$0xff]
  %v2651 = vld [vmem:[%s2601 + $0x188] sm:$0xff]
  %v2652 = vld [vmem:[%s2601 + $0x190] sm:$0xff]
  %v2653 = vld [vmem:[%s2601 + $0x198] sm:$0xff]
  %v2654 = vld [vmem:[%s2601 + $0x1a0] sm:$0xff]
  %v2655 = vld [vmem:[%s2601 + $0x1a8] sm:$0xff]
  %v2656 = vld [vmem:[%s2601 + $0x1b0] sm:$0xff]
  %v2657 = vld [vmem:[%s2601 + $0x1b8] sm:$0xff]
  %v2658 = vld [vmem:[%s2601 + $0x1c0] sm:$0xff]
  %v2659 = vld [vmem:[%s2601 + $0x1c8] sm:$0xff]
  %v2660 = vld [vmem:[%s2601 + $0x1d0] sm:$0xff]
  %v2661 = vld [vmem:[%s2601 + $0x1d8] sm:$0xff]
  %v2662 = vld [vmem:[%s2601 + $0x1e0] sm:$0xff]
  %v2663 = vld [vmem:[%s2601 + $0x1e8] sm:$0xff]
  %v2664 = vld [vmem:[%s2601 + $0x1f0] sm:$0xff]
  %v2665 = vld [vmem:[%s2601 + $0x1f8] sm:$0xff]
  %v2666 = vld [vmem:[%s2601 + $0x200] sm:$0xff]
  %v2667 = vld [vmem:[%s2601 + $0x208] sm:$0xff]
  %v2668 = vld [vmem:[%s2601 + $0x210] sm:$0xff]
  %v2669 = vld [vmem:[%s2601 + $0x218] sm:$0xff]
  %v2670 = vld [vmem:[%s2601 + $0x220] sm:$0xff]
  %v2671 = vld [vmem:[%s2601 + $0x228] sm:$0xff]
  %v2672 = vld [vmem:[%s2601 + $0x230] sm:$0xff]
  %v2673 = vld [vmem:[%s2601 + $0x238] sm:$0xff]
  %v2674 = vld [vmem:[%s2601 + $0x240] sm:$0xff]
  %v2675 = vld [vmem:[%s2601 + $0x248] sm:$0xff]
  %v2676 = vld [vmem:[%s2601 + $0x250] sm:$0xff]
  %v2677 = vld [vmem:[%s2601 + $0x258] sm:$0xff]
  %v2678 = vld [vmem:[%s2601 + $0x260] sm:$0xff]
  %v2679 = vld [vmem:[%s2601 + $0x268] sm:$0xff]
  %v2680 = vld [vmem:[%s2601 + $0x270] sm:$0xff]
  %v2681 = vld [vmem:[%s2601 + $0x278] sm:$0xff]
  %v2682 = vld [vmem:[%s2601 + $0x280] sm:$0xff]
  %v2683 = vld [vmem:[%s2601 + $0x288] sm:$0xff]
  %v2684 = vld [vmem:[%s2601 + $0x290] sm:$0xff]
  %v2685 = vld [vmem:[%s2601 + $0x298] sm:$0xff]
  %v2686 = vld [vmem:[%s2601 + $0x2a0] sm:$0xff]
  %v2687 = vld [vmem:[%s2601 + $0x2a8] sm:$0xff]
  %v2688 = vld [vmem:[%s2601 + $0x2b0] sm:$0xff]
  %v2689 = vld [vmem:[%s2601 + $0x2b8] sm:$0xff]
  %v2690 = vld [vmem:[%s2601 + $0x2c0] sm:$0xff]
  %v2691 = vld [vmem:[%s2601 + $0x2c8] sm:$0xff]
  %v2692 = vld [vmem:[%s2601 + $0x2d0] sm:$0xff]
  %v2693 = vld [vmem:[%s2601 + $0x2d8] sm:$0xff]
  %v2694 = vld [vmem:[%s2601 + $0x2e0] sm:$0xff]
  %v2695 = vld [vmem:[%s2601 + $0x2e8] sm:$0xff]
  %v2696 = vld [vmem:[%s2601 + $0x2f0] sm:$0xff]
  %v2697 = vld [vmem:[%s2601 + $0x2f8] sm:$0xff]
  %v2698 = vld [vmem:[%s2601 + $0x300] sm:$0xff]
  %v2699 = vld [vmem:[%s2601 + $0x308] sm:$0xff]
  %v2700 = vld [vmem:[%s2601 + $0x310] sm:$0xff]
  %v2701 = vld [vmem:[%s2601 + $0x318] sm:$0xff]
  %v2702 = vld [vmem:[%s2601 + $0x320] sm:$0xff]
  %v2703 = vld [vmem:[%s2601 + $0x328] sm:$0xff]
  %v2704 = vld [vmem:[%s2601 + $0x330] sm:$0xff]
  %v2705 = vld [vmem:[%s2601 + $0x338] sm:$0xff]
  %v2706 = vld [vmem:[%s2601 + $0x340] sm:$0xff]
  %v2707 = vld [vmem:[%s2601 + $0x348] sm:$0xff]
  %v2708 = vld [vmem:[%s2601 + $0x350] sm:$0xff]
  %v2709 = vld [vmem:[%s2601 + $0x358] sm:$0xff]
  %v2711 = vsel %vm88, %v2604, 0
  %v2714 = vsel %vm88, %v2607, 0
  %v2717 = vsel %vm88, %v2610, 0
  %v2720 = vsel %vm88, %v2613, 0
  %v2723 = vsel %vm88, %v2616, 0
  %v2726 = vsel %vm88, %v2619, 0
  %v2729 = vsel %vm88, %v2622, 0
  %v2732 = vsel %vm88, %v2625, 0
  %v2735 = vsel %vm88, %v2628, 0
  %v2738 = vsel %vm88, %v2631, 0
  %v2741 = vsel %vm88, %v2634, 0
  %v2744 = vsel %vm88, %v2637, 0
  %v2747 = vsel %vm88, %v2640, 0
  %v2750 = vsel %vm88, %v2643, 0
  %v2753 = vsel %vm88, %v2646, 0
  %v2756 = vsel %vm88, %v2649, 0
  %v2759 = vsel %vm88, %v2652, 0
  %v2762 = vsel %vm88, %v2655, 0
  %v2765 = vsel %vm88, %v2658, 0
  %v2768 = vsel %vm88, %v2661, 0
  %v2771 = vsel %vm88, %v2664, 0
  %v2774 = vsel %vm88, %v2667, 0
  %v2777 = vsel %vm88, %v2670, 0
  %v2780 = vsel %vm88, %v2673, 0
  %v2783 = vsel %vm88, %v2676, 0
  %v2786 = vsel %vm88, %v2679, 0
  %v2789 = vsel %vm88, %v2682, 0
  %v2792 = vsel %vm88, %v2685, 0
  %v2795 = vsel %vm88, %v2688, 0
  %v2798 = vsel %vm88, %v2691, 0
  %v2801 = vsel %vm88, %v2694, 0
  %v2804 = vsel %vm88, %v2697, 0
  %v2807 = vsel %vm88, %v2700, 0
  %v2810 = vsel %vm88, %v2703, 0
  %v2813 = vsel %vm88, %v2706, 0
  %v2816 = vsel %vm88, %v2709, 0
  %2818 = vmatprep.subr.mxu0 0.0
  %2819 = vmatpush1.msra.mxu0 %v457
  %2820 = vmatprep.subr.mxu0 0.0
  %2821 = vmatpush1.msra.mxu0 %v456
  %2822 = vmatprep.subr.mxu0 0.0
  %2823 = vmatpush1.msra.mxu0 %v455
  %2824 = vmatprep.subr.mxu0 0.0
  %2825 = vmatpush1.msra.mxu0 %v454
  %2826 = vmatprep.subr.mxu0 0.0
  %2827 = vmatpush1.msra.mxu0 %v453
  %2828 = vmatprep.subr.mxu0 0.0
  %2829 = vmatpush1.msra.mxu0 %v452
  %2830 = vmatprep.subr.mxu0 0.0
  %2831 = vmatpush1.msra.mxu0 %v451
  %2832 = vmatprep.subr.mxu0 0.0
  %2833 = vmatpush1.msra.mxu0 %v450
  %2834 = vmatprep.subr.mxu0 0.0
  %2835 = vmatpush1.msra.mxu0 %v449
  %2836 = vmatprep.subr.mxu0 0.0
  %2837 = vmatpush1.msra.mxu0 %v448
  %2838 = vmatprep.subr.mxu0 0.0
  %2839 = vmatpush1.msra.mxu0 %v447
  %2840 = vmatprep.subr.mxu0 0.0
  %2841 = vmatpush1.msra.mxu0 %v446
  %2842 = vmatprep.subr.mxu0 0.0
  %2843 = vmatpush1.msra.mxu0 %v445
  %2844 = vmatprep.subr.mxu0 0.0
  %2845 = vmatpush1.msra.mxu0 %v444
  %2846 = vmatprep.subr.mxu0 0.0
  %2847 = vmatpush1.msra.mxu0 %v443
  %2848 = vmatprep.subr.mxu0 0.0
  %2849 = vmatpush1.msra.mxu0 %v442
  %2850 = vmatprep.subr.mxu0 0.0
  %2851 = vmatpush2.msra.mxu0 %v473
  %2852 = vmatprep.subr.mxu0 0.0
  %2853 = vmatpush2.msra.mxu0 %v472
  %2854 = vmatprep.subr.mxu0 0.0
  %2855 = vmatpush2.msra.mxu0 %v471
  %2856 = vmatprep.subr.mxu0 0.0
  %2857 = vmatpush2.msra.mxu0 %v470
  %2858 = vmatprep.subr.mxu0 0.0
  %2859 = vmatpush2.msra.mxu0 %v469
  %2860 = vmatprep.subr.mxu0 0.0
  %2861 = vmatpush2.msra.mxu0 %v468
  %2862 = vmatprep.subr.mxu0 0.0
  %2863 = vmatpush2.msra.mxu0 %v467
  %2864 = vmatprep.subr.mxu0 0.0
  %2865 = vmatpush2.msra.mxu0 %v466
  %2866 = vmatprep.subr.mxu0 0.0
  %2867 = vmatpush2.msra.mxu0 %v465
  %2868 = vmatprep.subr.mxu0 0.0
  %2869 = vmatpush2.msra.mxu0 %v464
  %2870 = vmatprep.subr.mxu0 0.0
  %2871 = vmatpush2.msra.mxu0 %v463
  %2872 = vmatprep.subr.mxu0 0.0
  %2873 = vmatpush2.msra.mxu0 %v462
  %2874 = vmatprep.subr.mxu0 0.0
  %2875 = vmatpush2.msra.mxu0 %v461
  %2876 = vmatprep.subr.mxu0 0.0
  %2877 = vmatpush2.msra.mxu0 %v460
  %2878 = vmatprep.subr.mxu0 0.0
  %2879 = vmatpush2.msra.mxu0 %v459
  %2880 = vmatprep.subr.mxu0 0.0
  %2881 = vmatpush2.msra.mxu0 %v458
  %2882 = vmatprep.mubr.f32.mxu0 %v2603
  %2883 = vmatmul.mubr.f32.gmra.mxu0 %v2602
  %v2884 = vpop.f32.mrf.mxu0
  %v2885 = vadd.f32 0.0, %v2884
  %v2886 = vpop.f32.mrf.mxu0
  %2887 = vmatprep.mubr.f32.mxu0 %v2606
  %2888 = vmatmul.mubr.f32.gmra.mxu0 %v2605
  %v2889 = vpop.f32.mrf.mxu0
  %v2890 = vadd.f32 0.0, %v2889
  %v2891 = vpop.f32.mrf.mxu0
  %2892 = vmatprep.mubr.f32.mxu0 %v2609
  %2893 = vmatmul.mubr.f32.gmra.mxu0 %v2608
  %v2894 = vpop.f32.mrf.mxu0
  %v2895 = vadd.f32 0.0, %v2894
  %v2896 = vpop.f32.mrf.mxu0
  %2897 = vmatprep.mubr.f32.mxu0 %v2612
  %2898 = vmatmul.mubr.f32.gmra.mxu0 %v2611
  %v2899 = vpop.f32.mrf.mxu0
  %v2900 = vadd.f32 0.0, %v2899
  %v2901 = vpop.f32.mrf.mxu0
  %2902 = vmatprep.mubr.f32.mxu0 %v2615
  %2903 = vmatmul.mubr.f32.gmra.mxu0 %v2614
  %v2904 = vpop.f32.mrf.mxu0
  %v2905 = vadd.f32 0.0, %v2904
  %v2906 = vpop.f32.mrf.mxu0
  %2907 = vmatprep.mubr.f32.mxu0 %v2618
  %2908 = vmatmul.mubr.f32.gmra.mxu0 %v2617
  %v2909 = vpop.f32.mrf.mxu0
  %v2910 = vadd.f32 0.0, %v2909
  %v2911 = vpop.f32.mrf.mxu0
  %2912 = vmatprep.mubr.f32.mxu0 %v2621
  %2913 = vmatmul.mubr.f32.gmra.mxu0 %v2620
  %v2914 = vpop.f32.mrf.mxu0
  %v2915 = vadd.f32 0.0, %v2914
  %v2916 = vpop.f32.mrf.mxu0
  %2917 = vmatprep.mubr.f32.mxu0 %v2624
  %2918 = vmatmul.mubr.f32.gmra.mxu0 %v2623
  %v2919 = vpop.f32.mrf.mxu0
  %v2920 = vadd.f32 0.0, %v2919
  %v2921 = vpop.f32.mrf.mxu0
  %2922 = vmatprep.mubr.f32.mxu0 %v2627
  %2923 = vmatmul.mubr.f32.gmra.mxu0 %v2626
  %v2924 = vpop.f32.mrf.mxu0
  %v2925 = vadd.f32 0.0, %v2924
  %v2926 = vpop.f32.mrf.mxu0
  %2927 = vmatprep.mubr.f32.mxu0 %v2630
  %2928 = vmatmul.mubr.f32.gmra.mxu0 %v2629
  %v2929 = vpop.f32.mrf.mxu0
  %v2930 = vadd.f32 0.0, %v2929
  %v2931 = vpop.f32.mrf.mxu0
  %2932 = vmatprep.mubr.f32.mxu0 %v2633
  %2933 = vmatmul.mubr.f32.gmra.mxu0 %v2632
  %v2934 = vpop.f32.mrf.mxu0
  %v2935 = vadd.f32 0.0, %v2934
  %v2936 = vpop.f32.mrf.mxu0
  %2937 = vmatprep.mubr.f32.mxu0 %v2636
  %2938 = vmatmul.mubr.f32.gmra.mxu0 %v2635
  %v2939 = vpop.f32.mrf.mxu0
  %v2940 = vadd.f32 0.0, %v2939
  %v2941 = vpop.f32.mrf.mxu0
  %2942 = vmatprep.mubr.f32.mxu0 %v2639
  %2943 = vmatmul.mubr.f32.gmra.mxu0 %v2638
  %v2944 = vpop.f32.mrf.mxu0
  %v2945 = vadd.f32 0.0, %v2944
  %v2946 = vpop.f32.mrf.mxu0
  %2947 = vmatprep.mubr.f32.mxu0 %v2642
  %2948 = vmatmul.mubr.f32.gmra.mxu0 %v2641
  %v2949 = vpop.f32.mrf.mxu0
  %v2950 = vadd.f32 0.0, %v2949
  %v2951 = vpop.f32.mrf.mxu0
  %2952 = vmatprep.mubr.f32.mxu0 %v2645
  %2953 = vmatmul.mubr.f32.gmra.mxu0 %v2644
  %v2954 = vpop.f32.mrf.mxu0
  %v2955 = vadd.f32 0.0, %v2954
  %v2956 = vpop.f32.mrf.mxu0
  %2957 = vmatprep.mubr.f32.mxu0 %v2648
  %2958 = vmatmul.mubr.f32.gmra.mxu0 %v2647
  %v2959 = vpop.f32.mrf.mxu0
  %v2960 = vadd.f32 0.0, %v2959
  %v2961 = vpop.f32.mrf.mxu0
  %2962 = vmatprep.mubr.f32.mxu0 %v2651
  %2963 = vmatmul.mubr.f32.gmra.mxu0 %v2650
  %v2964 = vpop.f32.mrf.mxu0
  %v2965 = vadd.f32 0.0, %v2964
  %v2966 = vpop.f32.mrf.mxu0
  %2967 = vmatprep.mubr.f32.mxu0 %v2654
  %2968 = vmatmul.mubr.f32.gmra.mxu0 %v2653
  %v2969 = vpop.f32.mrf.mxu0
  %v2970 = vadd.f32 0.0, %v2969
  %v2971 = vpop.f32.mrf.mxu0
  %2972 = vmatprep.mubr.f32.mxu0 %v2657
  %2973 = vmatmul.mubr.f32.gmra.mxu0 %v2656
  %v2974 = vpop.f32.mrf.mxu0
  %v2975 = vadd.f32 0.0, %v2974
  %v2976 = vpop.f32.mrf.mxu0
  %2977 = vmatprep.mubr.f32.mxu0 %v2660
  %2978 = vmatmul.mubr.f32.gmra.mxu0 %v2659
  %v2979 = vpop.f32.mrf.mxu0
  %v2980 = vadd.f32 0.0, %v2979
  %v2981 = vpop.f32.mrf.mxu0
  %2982 = vmatprep.mubr.f32.mxu0 %v2663
  %2983 = vmatmul.mubr.f32.gmra.mxu0 %v2662
  %v2984 = vpop.f32.mrf.mxu0
  %v2985 = vadd.f32 0.0, %v2984
  %v2986 = vpop.f32.mrf.mxu0
  %2987 = vmatprep.mubr.f32.mxu0 %v2666
  %2988 = vmatmul.mubr.f32.gmra.mxu0 %v2665
  %v2989 = vpop.f32.mrf.mxu0
  %v2990 = vadd.f32 0.0, %v2989
  %v2991 = vpop.f32.mrf.mxu0
  %2992 = vmatprep.mubr.f32.mxu0 %v2669
  %2993 = vmatmul.mubr.f32.gmra.mxu0 %v2668
  %v2994 = vpop.f32.mrf.mxu0
  %v2995 = vadd.f32 0.0, %v2994
  %v2996 = vpop.f32.mrf.mxu0
  %2997 = vmatprep.mubr.f32.mxu0 %v2672
  %2998 = vmatmul.mubr.f32.gmra.mxu0 %v2671
  %v2999 = vpop.f32.mrf.mxu0
  %v3000 = vadd.f32 0.0, %v2999
  %v3001 = vpop.f32.mrf.mxu0
  %3002 = vmatprep.mubr.f32.mxu0 %v2675
  %3003 = vmatmul.mubr.f32.gmra.mxu0 %v2674
  %v3004 = vpop.f32.mrf.mxu0
  %v3005 = vadd.f32 0.0, %v3004
  %v3006 = vpop.f32.mrf.mxu0
  %3007 = vmatprep.mubr.f32.mxu0 %v2678
  %3008 = vmatmul.mubr.f32.gmra.mxu0 %v2677
  %v3009 = vpop.f32.mrf.mxu0
  %v3010 = vadd.f32 0.0, %v3009
  %v3011 = vpop.f32.mrf.mxu0
  %3012 = vmatprep.mubr.f32.mxu0 %v2681
  %3013 = vmatmul.mubr.f32.gmra.mxu0 %v2680
  %v3014 = vpop.f32.mrf.mxu0
  %v3015 = vadd.f32 0.0, %v3014
  %v3016 = vpop.f32.mrf.mxu0
  %3017 = vmatprep.mubr.f32.mxu0 %v2684
  %3018 = vmatmul.mubr.f32.gmra.mxu0 %v2683
  %v3019 = vpop.f32.mrf.mxu0
  %v3020 = vadd.f32 0.0, %v3019
  %v3021 = vpop.f32.mrf.mxu0
  %3022 = vmatprep.mubr.f32.mxu0 %v2687
  %3023 = vmatmul.mubr.f32.gmra.mxu0 %v2686
  %v3024 = vpop.f32.mrf.mxu0
  %v3025 = vadd.f32 0.0, %v3024
  %v3026 = vpop.f32.mrf.mxu0
  %3027 = vmatprep.mubr.f32.mxu0 %v2690
  %3028 = vmatmul.mubr.f32.gmra.mxu0 %v2689
  %v3029 = vpop.f32.mrf.mxu0
  %v3030 = vadd.f32 0.0, %v3029
  %v3031 = vpop.f32.mrf.mxu0
  %3032 = vmatprep.mubr.f32.mxu0 %v2693
  %3033 = vmatmul.mubr.f32.gmra.mxu0 %v2692
  %v3034 = vpop.f32.mrf.mxu0
  %v3035 = vadd.f32 0.0, %v3034
  %v3036 = vpop.f32.mrf.mxu0
  %3037 = vmatprep.mubr.f32.mxu0 %v2696
  %3038 = vmatmul.mubr.f32.gmra.mxu0 %v2695
  %v3039 = vpop.f32.mrf.mxu0
  %v3040 = vadd.f32 0.0, %v3039
  %v3041 = vpop.f32.mrf.mxu0
  %3042 = vmatprep.mubr.f32.mxu0 %v2699
  %3043 = vmatmul.mubr.f32.gmra.mxu0 %v2698
  %v3044 = vpop.f32.mrf.mxu0
  %v3045 = vadd.f32 0.0, %v3044
  %v3046 = vpop.f32.mrf.mxu0
  %3047 = vmatprep.mubr.f32.mxu0 %v2702
  %3048 = vmatmul.mubr.f32.gmra.mxu0 %v2701
  %v3049 = vpop.f32.mrf.mxu0
  %v3050 = vadd.f32 0.0, %v3049
  %v3051 = vpop.f32.mrf.mxu0
  %3052 = vmatprep.mubr.f32.mxu0 %v2705
  %3053 = vmatmul.mubr.f32.gmra.mxu0 %v2704
  %v3054 = vpop.f32.mrf.mxu0
  %v3055 = vadd.f32 0.0, %v3054
  %v3056 = vpop.f32.mrf.mxu0
  %3057 = vmatprep.mubr.f32.mxu0 %v2708
  %3058 = vmatmul.mubr.f32.gmra.mxu0 %v2707
  %v3059 = vpop.f32.mrf.mxu0
  %v3060 = vadd.f32 0.0, %v3059
  %v3061 = vpop.f32.mrf.mxu0
  %3062 = vdwg.mxu0
  %3063 = vmatprep.subr.mxu0 0.0
  %3064 = vmatpush1.msra.mxu0 0.0
  %3065 = vmatprep.subr.mxu0 0.0
  %3066 = vmatpush1.msra.mxu0 0.0
  %3067 = vmatprep.subr.mxu0 0.0
  %3068 = vmatpush1.msra.mxu0 0.0
  %3069 = vmatprep.subr.mxu0 0.0
  %3070 = vmatpush1.msra.mxu0 0.0
  %3071 = vmatprep.subr.mxu0 0.0
  %3072 = vmatpush1.msra.mxu0 0.0
  %3073 = vmatprep.subr.mxu0 0.0
  %3074 = vmatpush1.msra.mxu0 0.0
  %3075 = vmatprep.subr.mxu0 0.0
  %3076 = vmatpush1.msra.mxu0 0.0
  %3077 = vmatprep.subr.mxu0 0.0
  %3078 = vmatpush1.msra.mxu0 0.0
  %3079 = vmatprep.subr.mxu0 0.0
  %3080 = vmatpush1.msra.mxu0 0.0
  %3081 = vmatprep.subr.mxu0 0.0
  %3082 = vmatpush1.msra.mxu0 0.0
  %3083 = vmatprep.subr.mxu0 0.0
  %3084 = vmatpush1.msra.mxu0 0.0
  %3085 = vmatprep.subr.mxu0 0.0
  %3086 = vmatpush1.msra.mxu0 0.0
  %3087 = vmatprep.subr.mxu0 0.0
  %3088 = vmatpush1.msra.mxu0 %v477
  %3089 = vmatprep.subr.mxu0 0.0
  %3090 = vmatpush1.msra.mxu0 %v476
  %3091 = vmatprep.subr.mxu0 0.0
  %3092 = vmatpush1.msra.mxu0 %v475
  %3093 = vmatprep.subr.mxu0 0.0
  %3094 = vmatpush1.msra.mxu0 %v474
  %3095 = vmatprep.subr.mxu0 0.0
  %3096 = vmatpush2.msra.mxu0 0.0
  %3097 = vmatprep.subr.mxu0 0.0
  %3098 = vmatpush2.msra.mxu0 0.0
  %3099 = vmatprep.subr.mxu0 0.0
  %3100 = vmatpush2.msra.mxu0 0.0
  %3101 = vmatprep.subr.mxu0 0.0
  %3102 = vmatpush2.msra.mxu0 0.0
  %3103 = vmatprep.subr.mxu0 0.0
  %3104 = vmatpush2.msra.mxu0 0.0
  %3105 = vmatprep.subr.mxu0 0.0
  %3106 = vmatpush2.msra.mxu0 0.0
  %3107 = vmatprep.subr.mxu0 0.0
  %3108 = vmatpush2.msra.mxu0 0.0
  %3109 = vmatprep.subr.mxu0 0.0
  %3110 = vmatpush2.msra.mxu0 0.0
  %3111 = vmatprep.subr.mxu0 0.0
  %3112 = vmatpush2.msra.mxu0 0.0
  %3113 = vmatprep.subr.mxu0 0.0
  %3114 = vmatpush2.msra.mxu0 0.0
  %3115 = vmatprep.subr.mxu0 0.0
  %3116 = vmatpush2.msra.mxu0 0.0
  %3117 = vmatprep.subr.mxu0 0.0
  %3118 = vmatpush2.msra.mxu0 0.0
  %3119 = vmatprep.subr.mxu0 0.0
  %3120 = vmatpush2.msra.mxu0 0.0
  %3121 = vmatprep.subr.mxu0 0.0
  %3122 = vmatpush2.msra.mxu0 0.0
  %3123 = vmatprep.subr.mxu0 0.0
  %3124 = vmatpush2.msra.mxu0 0.0
  %3125 = vmatprep.subr.mxu0 0.0
  %3126 = vmatpush2.msra.mxu0 0.0
  %3127 = vmatprep.mubr.f32.mxu0 0.0
  %3128 = vmatmul.mubr.f32.gmra.mxu0 %v2711
  %v3129 = vpop.f32.mrf.mxu0
  %v3130 = vadd.f32 %v2885, %v3129
  %v3131 = vpop.f32.mrf.mxu0
  %3132 = vmatprep.mubr.f32.mxu0 0.0
  %3133 = vmatmul.mubr.f32.gmra.mxu0 %v2714
  %v3134 = vpop.f32.mrf.mxu0
  %v3135 = vadd.f32 %v2890, %v3134
  %v3136 = vpop.f32.mrf.mxu0
  %3137 = vmatprep.mubr.f32.mxu0 0.0
  %3138 = vmatmul.mubr.f32.gmra.mxu0 %v2717
  %v3139 = vpop.f32.mrf.mxu0
  %v3140 = vadd.f32 %v2895, %v3139
  %v3141 = vpop.f32.mrf.mxu0
  %3142 = vmatprep.mubr.f32.mxu0 0.0
  %3143 = vmatmul.mubr.f32.gmra.mxu0 %v2720
  %v3144 = vpop.f32.mrf.mxu0
  %v3145 = vadd.f32 %v2900, %v3144
  %v3146 = vpop.f32.mrf.mxu0
  %3147 = vmatprep.mubr.f32.mxu0 0.0
  %3148 = vmatmul.mubr.f32.gmra.mxu0 %v2723
  %v3149 = vpop.f32.mrf.mxu0
  %v3150 = vadd.f32 %v2905, %v3149
  %v3151 = vpop.f32.mrf.mxu0
  %3152 = vmatprep.mubr.f32.mxu0 0.0
  %3153 = vmatmul.mubr.f32.gmra.mxu0 %v2726
  %v3154 = vpop.f32.mrf.mxu0
  %v3155 = vadd.f32 %v2910, %v3154
  %v3156 = vpop.f32.mrf.mxu0
  %3157 = vmatprep.mubr.f32.mxu0 0.0
  %3158 = vmatmul.mubr.f32.gmra.mxu0 %v2729
  %v3159 = vpop.f32.mrf.mxu0
  %v3160 = vadd.f32 %v2915, %v3159
  %v3161 = vpop.f32.mrf.mxu0
  %3162 = vmatprep.mubr.f32.mxu0 0.0
  %3163 = vmatmul.mubr.f32.gmra.mxu0 %v2732
  %v3164 = vpop.f32.mrf.mxu0
  %v3165 = vadd.f32 %v2920, %v3164
  %v3166 = vpop.f32.mrf.mxu0
  %3167 = vmatprep.mubr.f32.mxu0 0.0
  %3168 = vmatmul.mubr.f32.gmra.mxu0 %v2735
  %v3169 = vpop.f32.mrf.mxu0
  %v3170 = vadd.f32 %v2925, %v3169
  %v3171 = vpop.f32.mrf.mxu0
  %3172 = vmatprep.mubr.f32.mxu0 0.0
  %3173 = vmatmul.mubr.f32.gmra.mxu0 %v2738
  %v3174 = vpop.f32.mrf.mxu0
  %v3175 = vadd.f32 %v2930, %v3174
  %v3176 = vpop.f32.mrf.mxu0
  %3177 = vmatprep.mubr.f32.mxu0 0.0
  %3178 = vmatmul.mubr.f32.gmra.mxu0 %v2741
  %v3179 = vpop.f32.mrf.mxu0
  %v3180 = vadd.f32 %v2935, %v3179
  %v3181 = vpop.f32.mrf.mxu0
  %3182 = vmatprep.mubr.f32.mxu0 0.0
  %3183 = vmatmul.mubr.f32.gmra.mxu0 %v2744
  %v3184 = vpop.f32.mrf.mxu0
  %v3185 = vadd.f32 %v2940, %v3184
  %v3186 = vpop.f32.mrf.mxu0
  %3187 = vmatprep.mubr.f32.mxu0 0.0
  %3188 = vmatmul.mubr.f32.gmra.mxu0 %v2747
  %v3189 = vpop.f32.mrf.mxu0
  %v3190 = vadd.f32 %v2945, %v3189
  %v3191 = vpop.f32.mrf.mxu0
  %3192 = vmatprep.mubr.f32.mxu0 0.0
  %3193 = vmatmul.mubr.f32.gmra.mxu0 %v2750
  %v3194 = vpop.f32.mrf.mxu0
  %v3195 = vadd.f32 %v2950, %v3194
  %v3196 = vpop.f32.mrf.mxu0
  %3197 = vmatprep.mubr.f32.mxu0 0.0
  %3198 = vmatmul.mubr.f32.gmra.mxu0 %v2753
  %v3199 = vpop.f32.mrf.mxu0
  %v3200 = vadd.f32 %v2955, %v3199
  %v3201 = vpop.f32.mrf.mxu0
  %3202 = vmatprep.mubr.f32.mxu0 0.0
  %3203 = vmatmul.mubr.f32.gmra.mxu0 %v2756
  %v3204 = vpop.f32.mrf.mxu0
  %v3205 = vadd.f32 %v2960, %v3204
  %v3206 = vpop.f32.mrf.mxu0
  %3207 = vmatprep.mubr.f32.mxu0 0.0
  %3208 = vmatmul.mubr.f32.gmra.mxu0 %v2759
  %v3209 = vpop.f32.mrf.mxu0
  %v3210 = vadd.f32 %v2965, %v3209
  %v3211 = vpop.f32.mrf.mxu0
  %3212 = vmatprep.mubr.f32.mxu0 0.0
  %3213 = vmatmul.mubr.f32.gmra.mxu0 %v2762
  %v3214 = vpop.f32.mrf.mxu0
  %v3215 = vadd.f32 %v2970, %v3214
  %v3216 = vpop.f32.mrf.mxu0
  %3217 = vmatprep.mubr.f32.mxu0 0.0
  %3218 = vmatmul.mubr.f32.gmra.mxu0 %v2765
  %v3219 = vpop.f32.mrf.mxu0
  %v3220 = vadd.f32 %v2975, %v3219
  %v3221 = vpop.f32.mrf.mxu0
  %3222 = vmatprep.mubr.f32.mxu0 0.0
  %3223 = vmatmul.mubr.f32.gmra.mxu0 %v2768
  %v3224 = vpop.f32.mrf.mxu0
  %v3225 = vadd.f32 %v2980, %v3224
  %v3226 = vpop.f32.mrf.mxu0
  %3227 = vmatprep.mubr.f32.mxu0 0.0
  %3228 = vmatmul.mubr.f32.gmra.mxu0 %v2771
  %v3229 = vpop.f32.mrf.mxu0
  %v3230 = vadd.f32 %v2985, %v3229
  %v3231 = vpop.f32.mrf.mxu0
  %3232 = vmatprep.mubr.f32.mxu0 0.0
  %3233 = vmatmul.mubr.f32.gmra.mxu0 %v2774
  %v3234 = vpop.f32.mrf.mxu0
  %v3235 = vadd.f32 %v2990, %v3234
  %v3236 = vpop.f32.mrf.mxu0
  %3237 = vmatprep.mubr.f32.mxu0 0.0
  %3238 = vmatmul.mubr.f32.gmra.mxu0 %v2777
  %v3239 = vpop.f32.mrf.mxu0
  %v3240 = vadd.f32 %v2995, %v3239
  %v3241 = vpop.f32.mrf.mxu0
  %3242 = vmatprep.mubr.f32.mxu0 0.0
  %3243 = vmatmul.mubr.f32.gmra.mxu0 %v2780
  %v3244 = vpop.f32.mrf.mxu0
  %v3245 = vadd.f32 %v3000, %v3244
  %v3246 = vpop.f32.mrf.mxu0
  %3247 = vmatprep.mubr.f32.mxu0 0.0
  %3248 = vmatmul.mubr.f32.gmra.mxu0 %v2783
  %v3249 = vpop.f32.mrf.mxu0
  %v3250 = vadd.f32 %v3005, %v3249
  %v3251 = vpop.f32.mrf.mxu0
  %3252 = vmatprep.mubr.f32.mxu0 0.0
  %3253 = vmatmul.mubr.f32.gmra.mxu0 %v2786
  %v3254 = vpop.f32.mrf.mxu0
  %v3255 = vadd.f32 %v3010, %v3254
  %v3256 = vpop.f32.mrf.mxu0
  %3257 = vmatprep.mubr.f32.mxu0 0.0
  %3258 = vmatmul.mubr.f32.gmra.mxu0 %v2789
  %v3259 = vpop.f32.mrf.mxu0
  %v3260 = vadd.f32 %v3015, %v3259
  %v3261 = vpop.f32.mrf.mxu0
  %3262 = vmatprep.mubr.f32.mxu0 0.0
  %3263 = vmatmul.mubr.f32.gmra.mxu0 %v2792
  %v3264 = vpop.f32.mrf.mxu0
  %v3265 = vadd.f32 %v3020, %v3264
  %v3266 = vpop.f32.mrf.mxu0
  %3267 = vmatprep.mubr.f32.mxu0 0.0
  %3268 = vmatmul.mubr.f32.gmra.mxu0 %v2795
  %v3269 = vpop.f32.mrf.mxu0
  %v3270 = vadd.f32 %v3025, %v3269
  %v3271 = vpop.f32.mrf.mxu0
  %3272 = vmatprep.mubr.f32.mxu0 0.0
  %3273 = vmatmul.mubr.f32.gmra.mxu0 %v2798
  %v3274 = vpop.f32.mrf.mxu0
  %v3275 = vadd.f32 %v3030, %v3274
  %v3276 = vpop.f32.mrf.mxu0
  %3277 = vmatprep.mubr.f32.mxu0 0.0
  %3278 = vmatmul.mubr.f32.gmra.mxu0 %v2801
  %v3279 = vpop.f32.mrf.mxu0
  %v3280 = vadd.f32 %v3035, %v3279
  %v3281 = vpop.f32.mrf.mxu0
  %3282 = vmatprep.mubr.f32.mxu0 0.0
  %3283 = vmatmul.mubr.f32.gmra.mxu0 %v2804
  %v3284 = vpop.f32.mrf.mxu0
  %v3285 = vadd.f32 %v3040, %v3284
  %v3286 = vpop.f32.mrf.mxu0
  %3287 = vmatprep.mubr.f32.mxu0 0.0
  %3288 = vmatmul.mubr.f32.gmra.mxu0 %v2807
  %v3289 = vpop.f32.mrf.mxu0
  %v3290 = vadd.f32 %v3045, %v3289
  %v3291 = vpop.f32.mrf.mxu0
  %3292 = vmatprep.mubr.f32.mxu0 0.0
  %3293 = vmatmul.mubr.f32.gmra.mxu0 %v2810
  %v3294 = vpop.f32.mrf.mxu0
  %v3295 = vadd.f32 %v3050, %v3294
  %v3296 = vpop.f32.mrf.mxu0
  %3297 = vmatprep.mubr.f32.mxu0 0.0
  %3298 = vmatmul.mubr.f32.gmra.mxu0 %v2813
  %v3299 = vpop.f32.mrf.mxu0
  %v3300 = vadd.f32 %v3055, %v3299
  %v3301 = vpop.f32.mrf.mxu0
  %3302 = vmatprep.mubr.f32.mxu0 0.0
  %3303 = vmatmul.mubr.f32.gmra.mxu0 %v2816
  %v3304 = vpop.f32.mrf.mxu0
  %v3305 = vadd.f32 %v3060, %v3304
  %v3306 = vpop.f32.mrf.mxu0
  %3307 = vdwg.mxu0
  %s3308 = scalar_lea.vmem %s4, 16
  %v3309 = vld [vmem:[%s3308] sm:$0xff]
  %v3311 = vsel %vm1894, %v3130, 0
  %v3314 = vsel %vm1894, %v3135, 0
  %v3317 = vsel %vm1894, %v3140, 0
  %v3320 = vsel %vm1894, %v3145, 0
  %v3323 = vsel %vm1894, %v3150, 0
  %v3326 = vsel %vm1894, %v3155, 0
  %v3329 = vsel %vm1894, %v3160, 0
  %v3332 = vsel %vm1894, %v3165, 0
  %v3335 = vsel %vm1894, %v3170, 0
  %v3338 = vsel %vm1894, %v3175, 0
  %v3341 = vsel %vm1894, %v3180, 0
  %v3344 = vsel %vm1894, %v3185, 0
  %v3347 = vsel %vm1894, %v3190, 0
  %v3350 = vsel %vm1894, %v3195, 0
  %v3353 = vsel %vm1894, %v3200, 0
  %v3356 = vsel %vm1894, %v3205, 0
  %v3359 = vsel %vm1894, %v3210, 0
  %v3362 = vsel %vm1894, %v3215, 0
  %v3365 = vsel %vm1894, %v3220, 0
  %v3368 = vsel %vm1894, %v3225, 0
  %v3371 = vsel %vm1894, %v3230, 0
  %v3374 = vsel %vm1894, %v3235, 0
  %v3377 = vsel %vm1894, %v3240, 0
  %v3380 = vsel %vm1894, %v3245, 0
  %v3383 = vsel %vm1894, %v3250, 0
  %v3386 = vsel %vm1894, %v3255, 0
  %v3389 = vsel %vm1894, %v3260, 0
  %v3392 = vsel %vm1894, %v3265, 0
  %v3395 = vsel %vm1894, %v3270, 0
  %v3398 = vsel %vm1894, %v3275, 0
  %v3401 = vsel %vm1894, %v3280, 0
  %v3404 = vsel %vm1894, %v3285, 0
  %v3407 = vsel %vm1894, %v3290, 0
  %v3410 = vsel %vm1894, %v3295, 0
  %v3413 = vsel %vm1894, %v3300, 0
  %v3416 = vsel %vm1894, %v3305, 0
  %3418 = vmatprep.subr.mxu0 0.0
  %3419 = vmatpush1.msra.mxu0 0.0
  %3420 = vmatprep.subr.mxu0 0.0
  %3421 = vmatpush1.msra.mxu0 0.0
  %3422 = vmatprep.subr.mxu0 0.0
  %3423 = vmatpush1.msra.mxu0 0.0
  %3424 = vmatprep.subr.mxu0 0.0
  %3425 = vmatpush1.msra.mxu0 0.0
  %3426 = vmatprep.subr.mxu0 0.0
  %3427 = vmatpush1.msra.mxu0 0.0
  %3428 = vmatprep.subr.mxu0 0.0
  %3429 = vmatpush1.msra.mxu0 0.0
  %3430 = vmatprep.subr.mxu0 0.0
  %3431 = vmatpush1.msra.mxu0 0.0
  %3432 = vmatprep.subr.mxu0 0.0
  %3433 = vmatpush1.msra.mxu0 0.0
  %3434 = vmatprep.subr.mxu0 0.0
  %3435 = vmatpush1.msra.mxu0 0.0
  %3436 = vmatprep.subr.mxu0 0.0
  %3437 = vmatpush1.msra.mxu0 0.0
  %3438 = vmatprep.subr.mxu0 0.0
  %3439 = vmatpush1.msra.mxu0 0.0
  %3440 = vmatprep.subr.mxu0 0.0
  %3441 = vmatpush1.msra.mxu0 0.0
  %3442 = vmatprep.subr.mxu0 0.0
  %3443 = vmatpush1.msra.mxu0 0.0
  %3444 = vmatprep.subr.mxu0 0.0
  %3445 = vmatpush1.msra.mxu0 0.0
  %3446 = vmatprep.subr.mxu0 0.0
  %3447 = vmatpush1.msra.mxu0 0.0
  %3448 = vmatprep.subr.mxu0 0.0
  %3449 = vmatpush1.msra.mxu0 %v3309
  %3450 = vmatprep.subr.mxu0 0.0
  %3451 = vmatpush2.msra.mxu0 0.0
  %3452 = vmatprep.subr.mxu0 0.0
  %3453 = vmatpush2.msra.mxu0 0.0
  %3454 = vmatprep.subr.mxu0 0.0
  %3455 = vmatpush2.msra.mxu0 0.0
  %3456 = vmatprep.subr.mxu0 0.0
  %3457 = vmatpush2.msra.mxu0 0.0
  %3458 = vmatprep.subr.mxu0 0.0
  %3459 = vmatpush2.msra.mxu0 0.0
  %3460 = vmatprep.subr.mxu0 0.0
  %3461 = vmatpush2.msra.mxu0 0.0
  %3462 = vmatprep.subr.mxu0 0.0
  %3463 = vmatpush2.msra.mxu0 0.0
  %3464 = vmatprep.subr.mxu0 0.0
  %3465 = vmatpush2.msra.mxu0 0.0
  %3466 = vmatprep.subr.mxu0 0.0
  %3467 = vmatpush2.msra.mxu0 0.0
  %3468 = vmatprep.subr.mxu0 0.0
  %3469 = vmatpush2.msra.mxu0 0.0
  %3470 = vmatprep.subr.mxu0 0.0
  %3471 = vmatpush2.msra.mxu0 0.0
  %3472 = vmatprep.subr.mxu0 0.0
  %3473 = vmatpush2.msra.mxu0 0.0
  %3474 = vmatprep.subr.mxu0 0.0
  %3475 = vmatpush2.msra.mxu0 0.0
  %3476 = vmatprep.subr.mxu0 0.0
  %3477 = vmatpush2.msra.mxu0 0.0
  %3478 = vmatprep.subr.mxu0 0.0
  %3479 = vmatpush2.msra.mxu0 0.0
  %3480 = vmatprep.subr.mxu0 0.0
  %3481 = vmatpush2.msra.mxu0 0.0
  %3482 = vmatprep.mubr.f32.mxu0 0.0
  %3483 = vmatmul.mubr.f32.gmra.mxu0 %v3311
  %v3484 = vpop.f32.mrf.mxu0
  %v3485 = vadd.f32 0.0, %v3484
  %v3486 = vpop.f32.mrf.mxu0
  %3487 = vmatprep.mubr.f32.mxu0 0.0
  %3488 = vmatmul.mubr.f32.gmra.mxu0 %v3314
  %v3489 = vpop.f32.mrf.mxu0
  %v3490 = vadd.f32 0.0, %v3489
  %v3491 = vpop.f32.mrf.mxu0
  %3492 = vmatprep.mubr.f32.mxu0 0.0
  %3493 = vmatmul.mubr.f32.gmra.mxu0 %v3317
  %v3494 = vpop.f32.mrf.mxu0
  %v3495 = vadd.f32 0.0, %v3494
  %v3496 = vpop.f32.mrf.mxu0
  %3497 = vmatprep.mubr.f32.mxu0 0.0
  %3498 = vmatmul.mubr.f32.gmra.mxu0 %v3320
  %v3499 = vpop.f32.mrf.mxu0
  %v3500 = vadd.f32 0.0, %v3499
  %v3501 = vpop.f32.mrf.mxu0
  %3502 = vmatprep.mubr.f32.mxu0 0.0
  %3503 = vmatmul.mubr.f32.gmra.mxu0 %v3323
  %v3504 = vpop.f32.mrf.mxu0
  %v3505 = vadd.f32 0.0, %v3504
  %v3506 = vpop.f32.mrf.mxu0
  %3507 = vmatprep.mubr.f32.mxu0 0.0
  %3508 = vmatmul.mubr.f32.gmra.mxu0 %v3326
  %v3509 = vpop.f32.mrf.mxu0
  %v3510 = vadd.f32 0.0, %v3509
  %v3511 = vpop.f32.mrf.mxu0
  %3512 = vmatprep.mubr.f32.mxu0 0.0
  %3513 = vmatmul.mubr.f32.gmra.mxu0 %v3329
  %v3514 = vpop.f32.mrf.mxu0
  %v3515 = vadd.f32 0.0, %v3514
  %v3516 = vpop.f32.mrf.mxu0
  %3517 = vmatprep.mubr.f32.mxu0 0.0
  %3518 = vmatmul.mubr.f32.gmra.mxu0 %v3332
  %v3519 = vpop.f32.mrf.mxu0
  %v3520 = vadd.f32 0.0, %v3519
  %v3521 = vpop.f32.mrf.mxu0
  %3522 = vmatprep.mubr.f32.mxu0 0.0
  %3523 = vmatmul.mubr.f32.gmra.mxu0 %v3335
  %v3524 = vpop.f32.mrf.mxu0
  %v3525 = vadd.f32 0.0, %v3524
  %v3526 = vpop.f32.mrf.mxu0
  %3527 = vmatprep.mubr.f32.mxu0 0.0
  %3528 = vmatmul.mubr.f32.gmra.mxu0 %v3338
  %v3529 = vpop.f32.mrf.mxu0
  %v3530 = vadd.f32 0.0, %v3529
  %v3531 = vpop.f32.mrf.mxu0
  %3532 = vmatprep.mubr.f32.mxu0 0.0
  %3533 = vmatmul.mubr.f32.gmra.mxu0 %v3341
  %v3534 = vpop.f32.mrf.mxu0
  %v3535 = vadd.f32 0.0, %v3534
  %v3536 = vpop.f32.mrf.mxu0
  %3537 = vmatprep.mubr.f32.mxu0 0.0
  %3538 = vmatmul.mubr.f32.gmra.mxu0 %v3344
  %v3539 = vpop.f32.mrf.mxu0
  %v3540 = vadd.f32 0.0, %v3539
  %v3541 = vpop.f32.mrf.mxu0
  %3542 = vmatprep.mubr.f32.mxu0 0.0
  %3543 = vmatmul.mubr.f32.gmra.mxu0 %v3347
  %v3544 = vpop.f32.mrf.mxu0
  %v3545 = vadd.f32 0.0, %v3544
  %v3546 = vpop.f32.mrf.mxu0
  %3547 = vmatprep.mubr.f32.mxu0 0.0
  %3548 = vmatmul.mubr.f32.gmra.mxu0 %v3350
  %v3549 = vpop.f32.mrf.mxu0
  %v3550 = vadd.f32 0.0, %v3549
  %v3551 = vpop.f32.mrf.mxu0
  %3552 = vmatprep.mubr.f32.mxu0 0.0
  %3553 = vmatmul.mubr.f32.gmra.mxu0 %v3353
  %v3554 = vpop.f32.mrf.mxu0
  %v3555 = vadd.f32 0.0, %v3554
  %v3556 = vpop.f32.mrf.mxu0
  %3557 = vmatprep.mubr.f32.mxu0 0.0
  %3558 = vmatmul.mubr.f32.gmra.mxu0 %v3356
  %v3559 = vpop.f32.mrf.mxu0
  %v3560 = vadd.f32 0.0, %v3559
  %v3561 = vpop.f32.mrf.mxu0
  %3562 = vmatprep.mubr.f32.mxu0 0.0
  %3563 = vmatmul.mubr.f32.gmra.mxu0 %v3359
  %v3564 = vpop.f32.mrf.mxu0
  %v3565 = vadd.f32 0.0, %v3564
  %v3566 = vpop.f32.mrf.mxu0
  %3567 = vmatprep.mubr.f32.mxu0 0.0
  %3568 = vmatmul.mubr.f32.gmra.mxu0 %v3362
  %v3569 = vpop.f32.mrf.mxu0
  %v3570 = vadd.f32 0.0, %v3569
  %v3571 = vpop.f32.mrf.mxu0
  %3572 = vmatprep.mubr.f32.mxu0 0.0
  %3573 = vmatmul.mubr.f32.gmra.mxu0 %v3365
  %v3574 = vpop.f32.mrf.mxu0
  %v3575 = vadd.f32 0.0, %v3574
  %v3576 = vpop.f32.mrf.mxu0
  %3577 = vmatprep.mubr.f32.mxu0 0.0
  %3578 = vmatmul.mubr.f32.gmra.mxu0 %v3368
  %v3579 = vpop.f32.mrf.mxu0
  %v3580 = vadd.f32 0.0, %v3579
  %v3581 = vpop.f32.mrf.mxu0
  %3582 = vmatprep.mubr.f32.mxu0 0.0
  %3583 = vmatmul.mubr.f32.gmra.mxu0 %v3371
  %v3584 = vpop.f32.mrf.mxu0
  %v3585 = vadd.f32 0.0, %v3584
  %v3586 = vpop.f32.mrf.mxu0
  %3587 = vmatprep.mubr.f32.mxu0 0.0
  %3588 = vmatmul.mubr.f32.gmra.mxu0 %v3374
  %v3589 = vpop.f32.mrf.mxu0
  %v3590 = vadd.f32 0.0, %v3589
  %v3591 = vpop.f32.mrf.mxu0
  %3592 = vmatprep.mubr.f32.mxu0 0.0
  %3593 = vmatmul.mubr.f32.gmra.mxu0 %v3377
  %v3594 = vpop.f32.mrf.mxu0
  %v3595 = vadd.f32 0.0, %v3594
  %v3596 = vpop.f32.mrf.mxu0
  %3597 = vmatprep.mubr.f32.mxu0 0.0
  %3598 = vmatmul.mubr.f32.gmra.mxu0 %v3380
  %v3599 = vpop.f32.mrf.mxu0
  %v3600 = vadd.f32 0.0, %v3599
  %v3601 = vpop.f32.mrf.mxu0
  %3602 = vmatprep.mubr.f32.mxu0 0.0
  %3603 = vmatmul.mubr.f32.gmra.mxu0 %v3383
  %v3604 = vpop.f32.mrf.mxu0
  %v3605 = vadd.f32 0.0, %v3604
  %v3606 = vpop.f32.mrf.mxu0
  %3607 = vmatprep.mubr.f32.mxu0 0.0
  %3608 = vmatmul.mubr.f32.gmra.mxu0 %v3386
  %v3609 = vpop.f32.mrf.mxu0
  %v3610 = vadd.f32 0.0, %v3609
  %v3611 = vpop.f32.mrf.mxu0
  %3612 = vmatprep.mubr.f32.mxu0 0.0
  %3613 = vmatmul.mubr.f32.gmra.mxu0 %v3389
  %v3614 = vpop.f32.mrf.mxu0
  %v3615 = vadd.f32 0.0, %v3614
  %v3616 = vpop.f32.mrf.mxu0
  %3617 = vmatprep.mubr.f32.mxu0 0.0
  %3618 = vmatmul.mubr.f32.gmra.mxu0 %v3392
  %v3619 = vpop.f32.mrf.mxu0
  %v3620 = vadd.f32 0.0, %v3619
  %v3621 = vpop.f32.mrf.mxu0
  %3622 = vmatprep.mubr.f32.mxu0 0.0
  %3623 = vmatmul.mubr.f32.gmra.mxu0 %v3395
  %v3624 = vpop.f32.mrf.mxu0
  %v3625 = vadd.f32 0.0, %v3624
  %v3626 = vpop.f32.mrf.mxu0
  %3627 = vmatprep.mubr.f32.mxu0 0.0
  %3628 = vmatmul.mubr.f32.gmra.mxu0 %v3398
  %v3629 = vpop.f32.mrf.mxu0
  %v3630 = vadd.f32 0.0, %v3629
  %v3631 = vpop.f32.mrf.mxu0
  %3632 = vmatprep.mubr.f32.mxu0 0.0
  %3633 = vmatmul.mubr.f32.gmra.mxu0 %v3401
  %v3634 = vpop.f32.mrf.mxu0
  %v3635 = vadd.f32 0.0, %v3634
  %v3636 = vpop.f32.mrf.mxu0
  %3637 = vmatprep.mubr.f32.mxu0 0.0
  %3638 = vmatmul.mubr.f32.gmra.mxu0 %v3404
  %v3639 = vpop.f32.mrf.mxu0
  %v3640 = vadd.f32 0.0, %v3639
  %v3641 = vpop.f32.mrf.mxu0
  %3642 = vmatprep.mubr.f32.mxu0 0.0
  %3643 = vmatmul.mubr.f32.gmra.mxu0 %v3407
  %v3644 = vpop.f32.mrf.mxu0
  %v3645 = vadd.f32 0.0, %v3644
  %v3646 = vpop.f32.mrf.mxu0
  %3647 = vmatprep.mubr.f32.mxu0 0.0
  %3648 = vmatmul.mubr.f32.gmra.mxu0 %v3410
  %v3649 = vpop.f32.mrf.mxu0
  %v3650 = vadd.f32 0.0, %v3649
  %v3651 = vpop.f32.mrf.mxu0
  %3652 = vmatprep.mubr.f32.mxu0 0.0
  %3653 = vmatmul.mubr.f32.gmra.mxu0 %v3413
  %v3654 = vpop.f32.mrf.mxu0
  %v3655 = vadd.f32 0.0, %v3654
  %v3656 = vpop.f32.mrf.mxu0
  %3657 = vmatprep.mubr.f32.mxu0 0.0
  %3658 = vmatmul.mubr.f32.gmra.mxu0 %v3416
  %v3659 = vpop.f32.mrf.mxu0
  %v3660 = vadd.f32 0.0, %v3659
  %v3661 = vpop.f32.mrf.mxu0
  %3662 = vdwg.mxu0
  %v3663 = vadd.f32 %v2423, %v3485
  %v3664 = vadd.f32 %v2428, %v3490
  %v3665 = vadd.f32 %v2433, %v3495
  %v3666 = vadd.f32 %v2438, %v3500
  %v3667 = vadd.f32 %v2443, %v3505
  %v3668 = vadd.f32 %v2448, %v3510
  %v3669 = vadd.f32 %v2453, %v3515
  %v3670 = vadd.f32 %v2458, %v3520
  %v3671 = vadd.f32 %v2463, %v3525
  %v3672 = vadd.f32 %v2468, %v3530
  %v3673 = vadd.f32 %v2473, %v3535
  %v3674 = vadd.f32 %v2478, %v3540
  %v3675 = vadd.f32 %v2483, %v3545
  %v3676 = vadd.f32 %v2488, %v3550
  %v3677 = vadd.f32 %v2493, %v3555
  %v3678 = vadd.f32 %v2498, %v3560
  %v3679 = vadd.f32 %v2503, %v3565
  %v3680 = vadd.f32 %v2508, %v3570
  %v3681 = vadd.f32 %v2513, %v3575
  %v3682 = vadd.f32 %v2518, %v3580
  %v3683 = vadd.f32 %v2523, %v3585
  %v3684 = vadd.f32 %v2528, %v3590
  %v3685 = vadd.f32 %v2533, %v3595
  %v3686 = vadd.f32 %v2538, %v3600
  %v3687 = vadd.f32 %v2543, %v3605
  %v3688 = vadd.f32 %v2548, %v3610
  %v3689 = vadd.f32 %v2553, %v3615
  %v3690 = vadd.f32 %v2558, %v3620
  %v3691 = vadd.f32 %v2563, %v3625
  %v3692 = vadd.f32 %v2568, %v3630
  %v3693 = vadd.f32 %v2573, %v3635
  %v3694 = vadd.f32 %v2578, %v3640
  %v3695 = vadd.f32 %v2583, %v3645
  %v3696 = vadd.f32 %v2588, %v3650
  %v3697 = vadd.f32 %v2593, %v3655
  %v3698 = vadd.f32 %v2598, %v3660
  %s3699 = scalar_lea.vmem %s3, 2592
  %v3700 = vld [vmem:[%s3699] sm:$0xff]
  %v3701 = vld [vmem:[%s3699 + $0x8] sm:$0xff]
  %v3702 = vld [vmem:[%s3699 + $0x10] sm:$0xff]
  %v3703 = vld [vmem:[%s3699 + $0x18] sm:$0xff]
  %v3704 = vld [vmem:[%s3699 + $0x20] sm:$0xff]
  %v3705 = vld [vmem:[%s3699 + $0x28] sm:$0xff]
  %v3706 = vld [vmem:[%s3699 + $0x30] sm:$0xff]
  %v3707 = vld [vmem:[%s3699 + $0x38] sm:$0xff]
  %v3708 = vld [vmem:[%s3699 + $0x40] sm:$0xff]
  %v3709 = vld [vmem:[%s3699 + $0x48] sm:$0xff]
  %v3710 = vld [vmem:[%s3699 + $0x50] sm:$0xff]
  %v3711 = vld [vmem:[%s3699 + $0x58] sm:$0xff]
  %v3712 = vld [vmem:[%s3699 + $0x60] sm:$0xff]
  %v3713 = vld [vmem:[%s3699 + $0x68] sm:$0xff]
  %v3714 = vld [vmem:[%s3699 + $0x70] sm:$0xff]
  %v3715 = vld [vmem:[%s3699 + $0x78] sm:$0xff]
  %v3716 = vld [vmem:[%s3699 + $0x80] sm:$0xff]
  %v3717 = vld [vmem:[%s3699 + $0x88] sm:$0xff]
  %v3718 = vld [vmem:[%s3699 + $0x90] sm:$0xff]
  %v3719 = vld [vmem:[%s3699 + $0x98] sm:$0xff]
  %v3720 = vld [vmem:[%s3699 + $0xa0] sm:$0xff]
  %v3721 = vld [vmem:[%s3699 + $0xa8] sm:$0xff]
  %v3722 = vld [vmem:[%s3699 + $0xb0] sm:$0xff]
  %v3723 = vld [vmem:[%s3699 + $0xb8] sm:$0xff]
  %v3724 = vld [vmem:[%s3699 + $0xc0] sm:$0xff]
  %v3725 = vld [vmem:[%s3699 + $0xc8] sm:$0xff]
  %v3726 = vld [vmem:[%s3699 + $0xd0] sm:$0xff]
  %v3727 = vld [vmem:[%s3699 + $0xd8] sm:$0xff]
  %v3728 = vld [vmem:[%s3699 + $0xe0] sm:$0xff]
  %v3729 = vld [vmem:[%s3699 + $0xe8] sm:$0xff]
  %v3730 = vld [vmem:[%s3699 + $0xf0] sm:$0xff]
  %v3731 = vld [vmem:[%s3699 + $0xf8] sm:$0xff]
  %v3732 = vld [vmem:[%s3699 + $0x100] sm:$0xff]
  %v3733 = vld [vmem:[%s3699 + $0x108] sm:$0xff]
  %v3734 = vld [vmem:[%s3699 + $0x110] sm:$0xff]
  %v3735 = vld [vmem:[%s3699 + $0x118] sm:$0xff]
  %v3736 = vld [vmem:[%s3699 + $0x120] sm:$0xff]
  %v3737 = vld [vmem:[%s3699 + $0x128] sm:$0xff]
  %v3738 = vld [vmem:[%s3699 + $0x130] sm:$0xff]
  %v3739 = vld [vmem:[%s3699 + $0x138] sm:$0xff]
  %v3740 = vld [vmem:[%s3699 + $0x140] sm:$0xff]
  %v3741 = vld [vmem:[%s3699 + $0x148] sm:$0xff]
  %v3742 = vld [vmem:[%s3699 + $0x150] sm:$0xff]
  %v3743 = vld [vmem:[%s3699 + $0x158] sm:$0xff]
  %v3744 = vld [vmem:[%s3699 + $0x160] sm:$0xff]
  %v3745 = vld [vmem:[%s3699 + $0x168] sm:$0xff]
  %v3746 = vld [vmem:[%s3699 + $0x170] sm:$0xff]
  %v3747 = vld [vmem:[%s3699 + $0x178] sm:$0xff]
  %v3748 = vld [vmem:[%s3699 + $0x180] sm:$0xff]
  %v3749 = vld [vmem:[%s3699 + $0x188] sm:$0xff]
  %v3750 = vld [vmem:[%s3699 + $0x190] sm:$0xff]
  %v3751 = vld [vmem:[%s3699 + $0x198] sm:$0xff]
  %v3752 = vld [vmem:[%s3699 + $0x1a0] sm:$0xff]
  %v3753 = vld [vmem:[%s3699 + $0x1a8] sm:$0xff]
  %v3754 = vld [vmem:[%s3699 + $0x1b0] sm:$0xff]
  %v3755 = vld [vmem:[%s3699 + $0x1b8] sm:$0xff]
  %v3756 = vld [vmem:[%s3699 + $0x1c0] sm:$0xff]
  %v3757 = vld [vmem:[%s3699 + $0x1c8] sm:$0xff]
  %v3758 = vld [vmem:[%s3699 + $0x1d0] sm:$0xff]
  %v3759 = vld [vmem:[%s3699 + $0x1d8] sm:$0xff]
  %v3760 = vld [vmem:[%s3699 + $0x1e0] sm:$0xff]
  %v3761 = vld [vmem:[%s3699 + $0x1e8] sm:$0xff]
  %v3762 = vld [vmem:[%s3699 + $0x1f0] sm:$0xff]
  %v3763 = vld [vmem:[%s3699 + $0x1f8] sm:$0xff]
  %v3764 = vld [vmem:[%s3699 + $0x200] sm:$0xff]
  %v3765 = vld [vmem:[%s3699 + $0x208] sm:$0xff]
  %v3766 = vld [vmem:[%s3699 + $0x210] sm:$0xff]
  %v3767 = vld [vmem:[%s3699 + $0x218] sm:$0xff]
  %v3768 = vld [vmem:[%s3699 + $0x220] sm:$0xff]
  %v3769 = vld [vmem:[%s3699 + $0x228] sm:$0xff]
  %v3770 = vld [vmem:[%s3699 + $0x230] sm:$0xff]
  %v3771 = vld [vmem:[%s3699 + $0x238] sm:$0xff]
  %v3772 = vld [vmem:[%s3699 + $0x240] sm:$0xff]
  %v3773 = vld [vmem:[%s3699 + $0x248] sm:$0xff]
  %v3774 = vld [vmem:[%s3699 + $0x250] sm:$0xff]
  %v3775 = vld [vmem:[%s3699 + $0x258] sm:$0xff]
  %v3776 = vld [vmem:[%s3699 + $0x260] sm:$0xff]
  %v3777 = vld [vmem:[%s3699 + $0x268] sm:$0xff]
  %v3778 = vld [vmem:[%s3699 + $0x270] sm:$0xff]
  %v3779 = vld [vmem:[%s3699 + $0x278] sm:$0xff]
  %v3780 = vld [vmem:[%s3699 + $0x280] sm:$0xff]
  %v3781 = vld [vmem:[%s3699 + $0x288] sm:$0xff]
  %v3782 = vld [vmem:[%s3699 + $0x290] sm:$0xff]
  %v3783 = vld [vmem:[%s3699 + $0x298] sm:$0xff]
  %v3784 = vld [vmem:[%s3699 + $0x2a0] sm:$0xff]
  %v3785 = vld [vmem:[%s3699 + $0x2a8] sm:$0xff]
  %v3786 = vld [vmem:[%s3699 + $0x2b0] sm:$0xff]
  %v3787 = vld [vmem:[%s3699 + $0x2b8] sm:$0xff]
  %v3788 = vld [vmem:[%s3699 + $0x2c0] sm:$0xff]
  %v3789 = vld [vmem:[%s3699 + $0x2c8] sm:$0xff]
  %v3790 = vld [vmem:[%s3699 + $0x2d0] sm:$0xff]
  %v3791 = vld [vmem:[%s3699 + $0x2d8] sm:$0xff]
  %v3792 = vld [vmem:[%s3699 + $0x2e0] sm:$0xff]
  %v3793 = vld [vmem:[%s3699 + $0x2e8] sm:$0xff]
  %v3794 = vld [vmem:[%s3699 + $0x2f0] sm:$0xff]
  %v3795 = vld [vmem:[%s3699 + $0x2f8] sm:$0xff]
  %v3796 = vld [vmem:[%s3699 + $0x300] sm:$0xff]
  %v3797 = vld [vmem:[%s3699 + $0x308] sm:$0xff]
  %v3798 = vld [vmem:[%s3699 + $0x310] sm:$0xff]
  %v3799 = vld [vmem:[%s3699 + $0x318] sm:$0xff]
  %v3800 = vld [vmem:[%s3699 + $0x320] sm:$0xff]
  %v3801 = vld [vmem:[%s3699 + $0x328] sm:$0xff]
  %v3802 = vld [vmem:[%s3699 + $0x330] sm:$0xff]
  %v3803 = vld [vmem:[%s3699 + $0x338] sm:$0xff]
  %v3804 = vld [vmem:[%s3699 + $0x340] sm:$0xff]
  %v3805 = vld [vmem:[%s3699 + $0x348] sm:$0xff]
  %v3806 = vld [vmem:[%s3699 + $0x350] sm:$0xff]
  %v3807 = vld [vmem:[%s3699 + $0x358] sm:$0xff]
  %v3809 = vsel %vm88, %v3702, 0
  %v3812 = vsel %vm88, %v3705, 0
  %v3815 = vsel %vm88, %v3708, 0
  %v3818 = vsel %vm88, %v3711, 0
  %v3821 = vsel %vm88, %v3714, 0
  %v3824 = vsel %vm88, %v3717, 0
  %v3827 = vsel %vm88, %v3720, 0
  %v3830 = vsel %vm88, %v3723, 0
  %v3833 = vsel %vm88, %v3726, 0
  %v3836 = vsel %vm88, %v3729, 0
  %v3839 = vsel %vm88, %v3732, 0
  %v3842 = vsel %vm88, %v3735, 0
  %v3845 = vsel %vm88, %v3738, 0
  %v3848 = vsel %vm88, %v3741, 0
  %v3851 = vsel %vm88, %v3744, 0
  %v3854 = vsel %vm88, %v3747, 0
  %v3857 = vsel %vm88, %v3750, 0
  %v3860 = vsel %vm88, %v3753, 0
  %v3863 = vsel %vm88, %v3756, 0
  %v3866 = vsel %vm88, %v3759, 0
  %v3869 = vsel %vm88, %v3762, 0
  %v3872 = vsel %vm88, %v3765, 0
  %v3875 = vsel %vm88, %v3768, 0
  %v3878 = vsel %vm88, %v3771, 0
  %v3881 = vsel %vm88, %v3774, 0
  %v3884 = vsel %vm88, %v3777, 0
  %v3887 = vsel %vm88, %v3780, 0
  %v3890 = vsel %vm88, %v3783, 0
  %v3893 = vsel %vm88, %v3786, 0
  %v3896 = vsel %vm88, %v3789, 0
  %v3899 = vsel %vm88, %v3792, 0
  %v3902 = vsel %vm88, %v3795, 0
  %v3905 = vsel %vm88, %v3798, 0
  %v3908 = vsel %vm88, %v3801, 0
  %v3911 = vsel %vm88, %v3804, 0
  %v3914 = vsel %vm88, %v3807, 0
  %3916 = vmatprep.subr.mxu0 0.0
  %3917 = vmatpush1.msra.mxu0 %v457
  %3918 = vmatprep.subr.mxu0 0.0
  %3919 = vmatpush1.msra.mxu0 %v456
  %3920 = vmatprep.subr.mxu0 0.0
  %3921 = vmatpush1.msra.mxu0 %v455
  %3922 = vmatprep.subr.mxu0 0.0
  %3923 = vmatpush1.msra.mxu0 %v454
  %3924 = vmatprep.subr.mxu0 0.0
  %3925 = vmatpush1.msra.mxu0 %v453
  %3926 = vmatprep.subr.mxu0 0.0
  %3927 = vmatpush1.msra.mxu0 %v452
  %3928 = vmatprep.subr.mxu0 0.0
  %3929 = vmatpush1.msra.mxu0 %v451
  %3930 = vmatprep.subr.mxu0 0.0
  %3931 = vmatpush1.msra.mxu0 %v450
  %3932 = vmatprep.subr.mxu0 0.0
  %3933 = vmatpush1.msra.mxu0 %v449
  %3934 = vmatprep.subr.mxu0 0.0
  %3935 = vmatpush1.msra.mxu0 %v448
  %3936 = vmatprep.subr.mxu0 0.0
  %3937 = vmatpush1.msra.mxu0 %v447
  %3938 = vmatprep.subr.mxu0 0.0
  %3939 = vmatpush1.msra.mxu0 %v446
  %3940 = vmatprep.subr.mxu0 0.0
  %3941 = vmatpush1.msra.mxu0 %v445
  %3942 = vmatprep.subr.mxu0 0.0
  %3943 = vmatpush1.msra.mxu0 %v444
  %3944 = vmatprep.subr.mxu0 0.0
  %3945 = vmatpush1.msra.mxu0 %v443
  %3946 = vmatprep.subr.mxu0 0.0
  %3947 = vmatpush1.msra.mxu0 %v442
  %3948 = vmatprep.subr.mxu0 0.0
  %3949 = vmatpush2.msra.mxu0 %v473
  %3950 = vmatprep.subr.mxu0 0.0
  %3951 = vmatpush2.msra.mxu0 %v472
  %3952 = vmatprep.subr.mxu0 0.0
  %3953 = vmatpush2.msra.mxu0 %v471
  %3954 = vmatprep.subr.mxu0 0.0
  %3955 = vmatpush2.msra.mxu0 %v470
  %3956 = vmatprep.subr.mxu0 0.0
  %3957 = vmatpush2.msra.mxu0 %v469
  %3958 = vmatprep.subr.mxu0 0.0
  %3959 = vmatpush2.msra.mxu0 %v468
  %3960 = vmatprep.subr.mxu0 0.0
  %3961 = vmatpush2.msra.mxu0 %v467
  %3962 = vmatprep.subr.mxu0 0.0
  %3963 = vmatpush2.msra.mxu0 %v466
  %3964 = vmatprep.subr.mxu0 0.0
  %3965 = vmatpush2.msra.mxu0 %v465
  %3966 = vmatprep.subr.mxu0 0.0
  %3967 = vmatpush2.msra.mxu0 %v464
  %3968 = vmatprep.subr.mxu0 0.0
  %3969 = vmatpush2.msra.mxu0 %v463
  %3970 = vmatprep.subr.mxu0 0.0
  %3971 = vmatpush2.msra.mxu0 %v462
  %3972 = vmatprep.subr.mxu0 0.0
  %3973 = vmatpush2.msra.mxu0 %v461
  %3974 = vmatprep.subr.mxu0 0.0
  %3975 = vmatpush2.msra.mxu0 %v460
  %3976 = vmatprep.subr.mxu0 0.0
  %3977 = vmatpush2.msra.mxu0 %v459
  %3978 = vmatprep.subr.mxu0 0.0
  %3979 = vmatpush2.msra.mxu0 %v458
  %3980 = vmatprep.mubr.f32.mxu0 %v3701
  %3981 = vmatmul.mubr.f32.gmra.mxu0 %v3700
  %v3982 = vpop.f32.mrf.mxu0
  %v3983 = vadd.f32 0.0, %v3982
  %v3984 = vpop.f32.mrf.mxu0
  %3985 = vmatprep.mubr.f32.mxu0 %v3704
  %3986 = vmatmul.mubr.f32.gmra.mxu0 %v3703
  %v3987 = vpop.f32.mrf.mxu0
  %v3988 = vadd.f32 0.0, %v3987
  %v3989 = vpop.f32.mrf.mxu0
  %3990 = vmatprep.mubr.f32.mxu0 %v3707
  %3991 = vmatmul.mubr.f32.gmra.mxu0 %v3706
  %v3992 = vpop.f32.mrf.mxu0
  %v3993 = vadd.f32 0.0, %v3992
  %v3994 = vpop.f32.mrf.mxu0
  %3995 = vmatprep.mubr.f32.mxu0 %v3710
  %3996 = vmatmul.mubr.f32.gmra.mxu0 %v3709
  %v3997 = vpop.f32.mrf.mxu0
  %v3998 = vadd.f32 0.0, %v3997
  %v3999 = vpop.f32.mrf.mxu0
  %4000 = vmatprep.mubr.f32.mxu0 %v3713
  %4001 = vmatmul.mubr.f32.gmra.mxu0 %v3712
  %v4002 = vpop.f32.mrf.mxu0
  %v4003 = vadd.f32 0.0, %v4002
  %v4004 = vpop.f32.mrf.mxu0
  %4005 = vmatprep.mubr.f32.mxu0 %v3716
  %4006 = vmatmul.mubr.f32.gmra.mxu0 %v3715
  %v4007 = vpop.f32.mrf.mxu0
  %v4008 = vadd.f32 0.0, %v4007
  %v4009 = vpop.f32.mrf.mxu0
  %4010 = vmatprep.mubr.f32.mxu0 %v3719
  %4011 = vmatmul.mubr.f32.gmra.mxu0 %v3718
  %v4012 = vpop.f32.mrf.mxu0
  %v4013 = vadd.f32 0.0, %v4012
  %v4014 = vpop.f32.mrf.mxu0
  %4015 = vmatprep.mubr.f32.mxu0 %v3722
  %4016 = vmatmul.mubr.f32.gmra.mxu0 %v3721
  %v4017 = vpop.f32.mrf.mxu0
  %v4018 = vadd.f32 0.0, %v4017
  %v4019 = vpop.f32.mrf.mxu0
  %4020 = vmatprep.mubr.f32.mxu0 %v3725
  %4021 = vmatmul.mubr.f32.gmra.mxu0 %v3724
  %v4022 = vpop.f32.mrf.mxu0
  %v4023 = vadd.f32 0.0, %v4022
  %v4024 = vpop.f32.mrf.mxu0
  %4025 = vmatprep.mubr.f32.mxu0 %v3728
  %4026 = vmatmul.mubr.f32.gmra.mxu0 %v3727
  %v4027 = vpop.f32.mrf.mxu0
  %v4028 = vadd.f32 0.0, %v4027
  %v4029 = vpop.f32.mrf.mxu0
  %4030 = vmatprep.mubr.f32.mxu0 %v3731
  %4031 = vmatmul.mubr.f32.gmra.mxu0 %v3730
  %v4032 = vpop.f32.mrf.mxu0
  %v4033 = vadd.f32 0.0, %v4032
  %v4034 = vpop.f32.mrf.mxu0
  %4035 = vmatprep.mubr.f32.mxu0 %v3734
  %4036 = vmatmul.mubr.f32.gmra.mxu0 %v3733
  %v4037 = vpop.f32.mrf.mxu0
  %v4038 = vadd.f32 0.0, %v4037
  %v4039 = vpop.f32.mrf.mxu0
  %4040 = vmatprep.mubr.f32.mxu0 %v3737
  %4041 = vmatmul.mubr.f32.gmra.mxu0 %v3736
  %v4042 = vpop.f32.mrf.mxu0
  %v4043 = vadd.f32 0.0, %v4042
  %v4044 = vpop.f32.mrf.mxu0
  %4045 = vmatprep.mubr.f32.mxu0 %v3740
  %4046 = vmatmul.mubr.f32.gmra.mxu0 %v3739
  %v4047 = vpop.f32.mrf.mxu0
  %v4048 = vadd.f32 0.0, %v4047
  %v4049 = vpop.f32.mrf.mxu0
  %4050 = vmatprep.mubr.f32.mxu0 %v3743
  %4051 = vmatmul.mubr.f32.gmra.mxu0 %v3742
  %v4052 = vpop.f32.mrf.mxu0
  %v4053 = vadd.f32 0.0, %v4052
  %v4054 = vpop.f32.mrf.mxu0
  %4055 = vmatprep.mubr.f32.mxu0 %v3746
  %4056 = vmatmul.mubr.f32.gmra.mxu0 %v3745
  %v4057 = vpop.f32.mrf.mxu0
  %v4058 = vadd.f32 0.0, %v4057
  %v4059 = vpop.f32.mrf.mxu0
  %4060 = vmatprep.mubr.f32.mxu0 %v3749
  %4061 = vmatmul.mubr.f32.gmra.mxu0 %v3748
  %v4062 = vpop.f32.mrf.mxu0
  %v4063 = vadd.f32 0.0, %v4062
  %v4064 = vpop.f32.mrf.mxu0
  %4065 = vmatprep.mubr.f32.mxu0 %v3752
  %4066 = vmatmul.mubr.f32.gmra.mxu0 %v3751
  %v4067 = vpop.f32.mrf.mxu0
  %v4068 = vadd.f32 0.0, %v4067
  %v4069 = vpop.f32.mrf.mxu0
  %4070 = vmatprep.mubr.f32.mxu0 %v3755
  %4071 = vmatmul.mubr.f32.gmra.mxu0 %v3754
  %v4072 = vpop.f32.mrf.mxu0
  %v4073 = vadd.f32 0.0, %v4072
  %v4074 = vpop.f32.mrf.mxu0
  %4075 = vmatprep.mubr.f32.mxu0 %v3758
  %4076 = vmatmul.mubr.f32.gmra.mxu0 %v3757
  %v4077 = vpop.f32.mrf.mxu0
  %v4078 = vadd.f32 0.0, %v4077
  %v4079 = vpop.f32.mrf.mxu0
  %4080 = vmatprep.mubr.f32.mxu0 %v3761
  %4081 = vmatmul.mubr.f32.gmra.mxu0 %v3760
  %v4082 = vpop.f32.mrf.mxu0
  %v4083 = vadd.f32 0.0, %v4082
  %v4084 = vpop.f32.mrf.mxu0
  %4085 = vmatprep.mubr.f32.mxu0 %v3764
  %4086 = vmatmul.mubr.f32.gmra.mxu0 %v3763
  %v4087 = vpop.f32.mrf.mxu0
  %v4088 = vadd.f32 0.0, %v4087
  %v4089 = vpop.f32.mrf.mxu0
  %4090 = vmatprep.mubr.f32.mxu0 %v3767
  %4091 = vmatmul.mubr.f32.gmra.mxu0 %v3766
  %v4092 = vpop.f32.mrf.mxu0
  %v4093 = vadd.f32 0.0, %v4092
  %v4094 = vpop.f32.mrf.mxu0
  %4095 = vmatprep.mubr.f32.mxu0 %v3770
  %4096 = vmatmul.mubr.f32.gmra.mxu0 %v3769
  %v4097 = vpop.f32.mrf.mxu0
  %v4098 = vadd.f32 0.0, %v4097
  %v4099 = vpop.f32.mrf.mxu0
  %4100 = vmatprep.mubr.f32.mxu0 %v3773
  %4101 = vmatmul.mubr.f32.gmra.mxu0 %v3772
  %v4102 = vpop.f32.mrf.mxu0
  %v4103 = vadd.f32 0.0, %v4102
  %v4104 = vpop.f32.mrf.mxu0
  %4105 = vmatprep.mubr.f32.mxu0 %v3776
  %4106 = vmatmul.mubr.f32.gmra.mxu0 %v3775
  %v4107 = vpop.f32.mrf.mxu0
  %v4108 = vadd.f32 0.0, %v4107
  %v4109 = vpop.f32.mrf.mxu0
  %4110 = vmatprep.mubr.f32.mxu0 %v3779
  %4111 = vmatmul.mubr.f32.gmra.mxu0 %v3778
  %v4112 = vpop.f32.mrf.mxu0
  %v4113 = vadd.f32 0.0, %v4112
  %v4114 = vpop.f32.mrf.mxu0
  %4115 = vmatprep.mubr.f32.mxu0 %v3782
  %4116 = vmatmul.mubr.f32.gmra.mxu0 %v3781
  %v4117 = vpop.f32.mrf.mxu0
  %v4118 = vadd.f32 0.0, %v4117
  %v4119 = vpop.f32.mrf.mxu0
  %4120 = vmatprep.mubr.f32.mxu0 %v3785
  %4121 = vmatmul.mubr.f32.gmra.mxu0 %v3784
  %v4122 = vpop.f32.mrf.mxu0
  %v4123 = vadd.f32 0.0, %v4122
  %v4124 = vpop.f32.mrf.mxu0
  %4125 = vmatprep.mubr.f32.mxu0 %v3788
  %4126 = vmatmul.mubr.f32.gmra.mxu0 %v3787
  %v4127 = vpop.f32.mrf.mxu0
  %v4128 = vadd.f32 0.0, %v4127
  %v4129 = vpop.f32.mrf.mxu0
  %4130 = vmatprep.mubr.f32.mxu0 %v3791
  %4131 = vmatmul.mubr.f32.gmra.mxu0 %v3790
  %v4132 = vpop.f32.mrf.mxu0
  %v4133 = vadd.f32 0.0, %v4132
  %v4134 = vpop.f32.mrf.mxu0
  %4135 = vmatprep.mubr.f32.mxu0 %v3794
  %4136 = vmatmul.mubr.f32.gmra.mxu0 %v3793
  %v4137 = vpop.f32.mrf.mxu0
  %v4138 = vadd.f32 0.0, %v4137
  %v4139 = vpop.f32.mrf.mxu0
  %4140 = vmatprep.mubr.f32.mxu0 %v3797
  %4141 = vmatmul.mubr.f32.gmra.mxu0 %v3796
  %v4142 = vpop.f32.mrf.mxu0
  %v4143 = vadd.f32 0.0, %v4142
  %v4144 = vpop.f32.mrf.mxu0
  %4145 = vmatprep.mubr.f32.mxu0 %v3800
  %4146 = vmatmul.mubr.f32.gmra.mxu0 %v3799
  %v4147 = vpop.f32.mrf.mxu0
  %v4148 = vadd.f32 0.0, %v4147
  %v4149 = vpop.f32.mrf.mxu0
  %4150 = vmatprep.mubr.f32.mxu0 %v3803
  %4151 = vmatmul.mubr.f32.gmra.mxu0 %v3802
  %v4152 = vpop.f32.mrf.mxu0
  %v4153 = vadd.f32 0.0, %v4152
  %v4154 = vpop.f32.mrf.mxu0
  %4155 = vmatprep.mubr.f32.mxu0 %v3806
  %4156 = vmatmul.mubr.f32.gmra.mxu0 %v3805
  %v4157 = vpop.f32.mrf.mxu0
  %v4158 = vadd.f32 0.0, %v4157
  %v4159 = vpop.f32.mrf.mxu0
  %4160 = vdwg.mxu0
  %4161 = vmatprep.subr.mxu0 0.0
  %4162 = vmatpush1.msra.mxu0 0.0
  %4163 = vmatprep.subr.mxu0 0.0
  %4164 = vmatpush1.msra.mxu0 0.0
  %4165 = vmatprep.subr.mxu0 0.0
  %4166 = vmatpush1.msra.mxu0 0.0
  %4167 = vmatprep.subr.mxu0 0.0
  %4168 = vmatpush1.msra.mxu0 0.0
  %4169 = vmatprep.subr.mxu0 0.0
  %4170 = vmatpush1.msra.mxu0 0.0
  %4171 = vmatprep.subr.mxu0 0.0
  %4172 = vmatpush1.msra.mxu0 0.0
  %4173 = vmatprep.subr.mxu0 0.0
  %4174 = vmatpush1.msra.mxu0 0.0
  %4175 = vmatprep.subr.mxu0 0.0
  %4176 = vmatpush1.msra.mxu0 0.0
  %4177 = vmatprep.subr.mxu0 0.0
  %4178 = vmatpush1.msra.mxu0 0.0
  %4179 = vmatprep.subr.mxu0 0.0
  %4180 = vmatpush1.msra.mxu0 0.0
  %4181 = vmatprep.subr.mxu0 0.0
  %4182 = vmatpush1.msra.mxu0 0.0
  %4183 = vmatprep.subr.mxu0 0.0
  %4184 = vmatpush1.msra.mxu0 0.0
  %4185 = vmatprep.subr.mxu0 0.0
  %4186 = vmatpush1.msra.mxu0 %v477
  %4187 = vmatprep.subr.mxu0 0.0
  %4188 = vmatpush1.msra.mxu0 %v476
  %4189 = vmatprep.subr.mxu0 0.0
  %4190 = vmatpush1.msra.mxu0 %v475
  %4191 = vmatprep.subr.mxu0 0.0
  %4192 = vmatpush1.msra.mxu0 %v474
  %4193 = vmatprep.subr.mxu0 0.0
  %4194 = vmatpush2.msra.mxu0 0.0
  %4195 = vmatprep.subr.mxu0 0.0
  %4196 = vmatpush2.msra.mxu0 0.0
  %4197 = vmatprep.subr.mxu0 0.0
  %4198 = vmatpush2.msra.mxu0 0.0
  %4199 = vmatprep.subr.mxu0 0.0
  %4200 = vmatpush2.msra.mxu0 0.0
  %4201 = vmatprep.subr.mxu0 0.0
  %4202 = vmatpush2.msra.mxu0 0.0
  %4203 = vmatprep.subr.mxu0 0.0
  %4204 = vmatpush2.msra.mxu0 0.0
  %4205 = vmatprep.subr.mxu0 0.0
  %4206 = vmatpush2.msra.mxu0 0.0
  %4207 = vmatprep.subr.mxu0 0.0
  %4208 = vmatpush2.msra.mxu0 0.0
  %4209 = vmatprep.subr.mxu0 0.0
  %4210 = vmatpush2.msra.mxu0 0.0
  %4211 = vmatprep.subr.mxu0 0.0
  %4212 = vmatpush2.msra.mxu0 0.0
  %4213 = vmatprep.subr.mxu0 0.0
  %4214 = vmatpush2.msra.mxu0 0.0
  %4215 = vmatprep.subr.mxu0 0.0
  %4216 = vmatpush2.msra.mxu0 0.0
  %4217 = vmatprep.subr.mxu0 0.0
  %4218 = vmatpush2.msra.mxu0 0.0
  %4219 = vmatprep.subr.mxu0 0.0
  %4220 = vmatpush2.msra.mxu0 0.0
  %4221 = vmatprep.subr.mxu0 0.0
  %4222 = vmatpush2.msra.mxu0 0.0
  %4223 = vmatprep.subr.mxu0 0.0
  %4224 = vmatpush2.msra.mxu0 0.0
  %4225 = vmatprep.mubr.f32.mxu0 0.0
  %4226 = vmatmul.mubr.f32.gmra.mxu0 %v3809
  %v4227 = vpop.f32.mrf.mxu0
  %v4228 = vadd.f32 %v3983, %v4227
  %v4229 = vpop.f32.mrf.mxu0
  %4230 = vmatprep.mubr.f32.mxu0 0.0
  %4231 = vmatmul.mubr.f32.gmra.mxu0 %v3812
  %v4232 = vpop.f32.mrf.mxu0
  %v4233 = vadd.f32 %v3988, %v4232
  %v4234 = vpop.f32.mrf.mxu0
  %4235 = vmatprep.mubr.f32.mxu0 0.0
  %4236 = vmatmul.mubr.f32.gmra.mxu0 %v3815
  %v4237 = vpop.f32.mrf.mxu0
  %v4238 = vadd.f32 %v3993, %v4237
  %v4239 = vpop.f32.mrf.mxu0
  %4240 = vmatprep.mubr.f32.mxu0 0.0
  %4241 = vmatmul.mubr.f32.gmra.mxu0 %v3818
  %v4242 = vpop.f32.mrf.mxu0
  %v4243 = vadd.f32 %v3998, %v4242
  %v4244 = vpop.f32.mrf.mxu0
  %4245 = vmatprep.mubr.f32.mxu0 0.0
  %4246 = vmatmul.mubr.f32.gmra.mxu0 %v3821
  %v4247 = vpop.f32.mrf.mxu0
  %v4248 = vadd.f32 %v4003, %v4247
  %v4249 = vpop.f32.mrf.mxu0
  %4250 = vmatprep.mubr.f32.mxu0 0.0
  %4251 = vmatmul.mubr.f32.gmra.mxu0 %v3824
  %v4252 = vpop.f32.mrf.mxu0
  %v4253 = vadd.f32 %v4008, %v4252
  %v4254 = vpop.f32.mrf.mxu0
  %4255 = vmatprep.mubr.f32.mxu0 0.0
  %4256 = vmatmul.mubr.f32.gmra.mxu0 %v3827
  %v4257 = vpop.f32.mrf.mxu0
  %v4258 = vadd.f32 %v4013, %v4257
  %v4259 = vpop.f32.mrf.mxu0
  %4260 = vmatprep.mubr.f32.mxu0 0.0
  %4261 = vmatmul.mubr.f32.gmra.mxu0 %v3830
  %v4262 = vpop.f32.mrf.mxu0
  %v4263 = vadd.f32 %v4018, %v4262
  %v4264 = vpop.f32.mrf.mxu0
  %4265 = vmatprep.mubr.f32.mxu0 0.0
  %4266 = vmatmul.mubr.f32.gmra.mxu0 %v3833
  %v4267 = vpop.f32.mrf.mxu0
  %v4268 = vadd.f32 %v4023, %v4267
  %v4269 = vpop.f32.mrf.mxu0
  %4270 = vmatprep.mubr.f32.mxu0 0.0
  %4271 = vmatmul.mubr.f32.gmra.mxu0 %v3836
  %v4272 = vpop.f32.mrf.mxu0
  %v4273 = vadd.f32 %v4028, %v4272
  %v4274 = vpop.f32.mrf.mxu0
  %4275 = vmatprep.mubr.f32.mxu0 0.0
  %4276 = vmatmul.mubr.f32.gmra.mxu0 %v3839
  %v4277 = vpop.f32.mrf.mxu0
  %v4278 = vadd.f32 %v4033, %v4277
  %v4279 = vpop.f32.mrf.mxu0
  %4280 = vmatprep.mubr.f32.mxu0 0.0
  %4281 = vmatmul.mubr.f32.gmra.mxu0 %v3842
  %v4282 = vpop.f32.mrf.mxu0
  %v4283 = vadd.f32 %v4038, %v4282
  %v4284 = vpop.f32.mrf.mxu0
  %4285 = vmatprep.mubr.f32.mxu0 0.0
  %4286 = vmatmul.mubr.f32.gmra.mxu0 %v3845
  %v4287 = vpop.f32.mrf.mxu0
  %v4288 = vadd.f32 %v4043, %v4287
  %v4289 = vpop.f32.mrf.mxu0
  %4290 = vmatprep.mubr.f32.mxu0 0.0
  %4291 = vmatmul.mubr.f32.gmra.mxu0 %v3848
  %v4292 = vpop.f32.mrf.mxu0
  %v4293 = vadd.f32 %v4048, %v4292
  %v4294 = vpop.f32.mrf.mxu0
  %4295 = vmatprep.mubr.f32.mxu0 0.0
  %4296 = vmatmul.mubr.f32.gmra.mxu0 %v3851
  %v4297 = vpop.f32.mrf.mxu0
  %v4298 = vadd.f32 %v4053, %v4297
  %v4299 = vpop.f32.mrf.mxu0
  %4300 = vmatprep.mubr.f32.mxu0 0.0
  %4301 = vmatmul.mubr.f32.gmra.mxu0 %v3854
  %v4302 = vpop.f32.mrf.mxu0
  %v4303 = vadd.f32 %v4058, %v4302
  %v4304 = vpop.f32.mrf.mxu0
  %4305 = vmatprep.mubr.f32.mxu0 0.0
  %4306 = vmatmul.mubr.f32.gmra.mxu0 %v3857
  %v4307 = vpop.f32.mrf.mxu0
  %v4308 = vadd.f32 %v4063, %v4307
  %v4309 = vpop.f32.mrf.mxu0
  %4310 = vmatprep.mubr.f32.mxu0 0.0
  %4311 = vmatmul.mubr.f32.gmra.mxu0 %v3860
  %v4312 = vpop.f32.mrf.mxu0
  %v4313 = vadd.f32 %v4068, %v4312
  %v4314 = vpop.f32.mrf.mxu0
  %4315 = vmatprep.mubr.f32.mxu0 0.0
  %4316 = vmatmul.mubr.f32.gmra.mxu0 %v3863
  %v4317 = vpop.f32.mrf.mxu0
  %v4318 = vadd.f32 %v4073, %v4317
  %v4319 = vpop.f32.mrf.mxu0
  %4320 = vmatprep.mubr.f32.mxu0 0.0
  %4321 = vmatmul.mubr.f32.gmra.mxu0 %v3866
  %v4322 = vpop.f32.mrf.mxu0
  %v4323 = vadd.f32 %v4078, %v4322
  %v4324 = vpop.f32.mrf.mxu0
  %4325 = vmatprep.mubr.f32.mxu0 0.0
  %4326 = vmatmul.mubr.f32.gmra.mxu0 %v3869
  %v4327 = vpop.f32.mrf.mxu0
  %v4328 = vadd.f32 %v4083, %v4327
  %v4329 = vpop.f32.mrf.mxu0
  %4330 = vmatprep.mubr.f32.mxu0 0.0
  %4331 = vmatmul.mubr.f32.gmra.mxu0 %v3872
  %v4332 = vpop.f32.mrf.mxu0
  %v4333 = vadd.f32 %v4088, %v4332
  %v4334 = vpop.f32.mrf.mxu0
  %4335 = vmatprep.mubr.f32.mxu0 0.0
  %4336 = vmatmul.mubr.f32.gmra.mxu0 %v3875
  %v4337 = vpop.f32.mrf.mxu0
  %v4338 = vadd.f32 %v4093, %v4337
  %v4339 = vpop.f32.mrf.mxu0
  %4340 = vmatprep.mubr.f32.mxu0 0.0
  %4341 = vmatmul.mubr.f32.gmra.mxu0 %v3878
  %v4342 = vpop.f32.mrf.mxu0
  %v4343 = vadd.f32 %v4098, %v4342
  %v4344 = vpop.f32.mrf.mxu0
  %4345 = vmatprep.mubr.f32.mxu0 0.0
  %4346 = vmatmul.mubr.f32.gmra.mxu0 %v3881
  %v4347 = vpop.f32.mrf.mxu0
  %v4348 = vadd.f32 %v4103, %v4347
  %v4349 = vpop.f32.mrf.mxu0
  %4350 = vmatprep.mubr.f32.mxu0 0.0
  %4351 = vmatmul.mubr.f32.gmra.mxu0 %v3884
  %v4352 = vpop.f32.mrf.mxu0
  %v4353 = vadd.f32 %v4108, %v4352
  %v4354 = vpop.f32.mrf.mxu0
  %4355 = vmatprep.mubr.f32.mxu0 0.0
  %4356 = vmatmul.mubr.f32.gmra.mxu0 %v3887
  %v4357 = vpop.f32.mrf.mxu0
  %v4358 = vadd.f32 %v4113, %v4357
  %v4359 = vpop.f32.mrf.mxu0
  %4360 = vmatprep.mubr.f32.mxu0 0.0
  %4361 = vmatmul.mubr.f32.gmra.mxu0 %v3890
  %v4362 = vpop.f32.mrf.mxu0
  %v4363 = vadd.f32 %v4118, %v4362
  %v4364 = vpop.f32.mrf.mxu0
  %4365 = vmatprep.mubr.f32.mxu0 0.0
  %4366 = vmatmul.mubr.f32.gmra.mxu0 %v3893
  %v4367 = vpop.f32.mrf.mxu0
  %v4368 = vadd.f32 %v4123, %v4367
  %v4369 = vpop.f32.mrf.mxu0
  %4370 = vmatprep.mubr.f32.mxu0 0.0
  %4371 = vmatmul.mubr.f32.gmra.mxu0 %v3896
  %v4372 = vpop.f32.mrf.mxu0
  %v4373 = vadd.f32 %v4128, %v4372
  %v4374 = vpop.f32.mrf.mxu0
  %4375 = vmatprep.mubr.f32.mxu0 0.0
  %4376 = vmatmul.mubr.f32.gmra.mxu0 %v3899
  %v4377 = vpop.f32.mrf.mxu0
  %v4378 = vadd.f32 %v4133, %v4377
  %v4379 = vpop.f32.mrf.mxu0
  %4380 = vmatprep.mubr.f32.mxu0 0.0
  %4381 = vmatmul.mubr.f32.gmra.mxu0 %v3902
  %v4382 = vpop.f32.mrf.mxu0
  %v4383 = vadd.f32 %v4138, %v4382
  %v4384 = vpop.f32.mrf.mxu0
  %4385 = vmatprep.mubr.f32.mxu0 0.0
  %4386 = vmatmul.mubr.f32.gmra.mxu0 %v3905
  %v4387 = vpop.f32.mrf.mxu0
  %v4388 = vadd.f32 %v4143, %v4387
  %v4389 = vpop.f32.mrf.mxu0
  %4390 = vmatprep.mubr.f32.mxu0 0.0
  %4391 = vmatmul.mubr.f32.gmra.mxu0 %v3908
  %v4392 = vpop.f32.mrf.mxu0
  %v4393 = vadd.f32 %v4148, %v4392
  %v4394 = vpop.f32.mrf.mxu0
  %4395 = vmatprep.mubr.f32.mxu0 0.0
  %4396 = vmatmul.mubr.f32.gmra.mxu0 %v3911
  %v4397 = vpop.f32.mrf.mxu0
  %v4398 = vadd.f32 %v4153, %v4397
  %v4399 = vpop.f32.mrf.mxu0
  %4400 = vmatprep.mubr.f32.mxu0 0.0
  %4401 = vmatmul.mubr.f32.gmra.mxu0 %v3914
  %v4402 = vpop.f32.mrf.mxu0
  %v4403 = vadd.f32 %v4158, %v4402
  %v4404 = vpop.f32.mrf.mxu0
  %4405 = vdwg.mxu0
  %s4406 = scalar_lea.vmem %s4, 24
  %v4407 = vld [vmem:[%s4406] sm:$0xff]
  %v4409 = vsel %vm1894, %v4228, 0
  %v4412 = vsel %vm1894, %v4233, 0
  %v4415 = vsel %vm1894, %v4238, 0
  %v4418 = vsel %vm1894, %v4243, 0
  %v4421 = vsel %vm1894, %v4248, 0
  %v4424 = vsel %vm1894, %v4253, 0
  %v4427 = vsel %vm1894, %v4258, 0
  %v4430 = vsel %vm1894, %v4263, 0
  %v4433 = vsel %vm1894, %v4268, 0
  %v4436 = vsel %vm1894, %v4273, 0
  %v4439 = vsel %vm1894, %v4278, 0
  %v4442 = vsel %vm1894, %v4283, 0
  %v4445 = vsel %vm1894, %v4288, 0
  %v4448 = vsel %vm1894, %v4293, 0
  %v4451 = vsel %vm1894, %v4298, 0
  %v4454 = vsel %vm1894, %v4303, 0
  %v4457 = vsel %vm1894, %v4308, 0
  %v4460 = vsel %vm1894, %v4313, 0
  %v4463 = vsel %vm1894, %v4318, 0
  %v4466 = vsel %vm1894, %v4323, 0
  %v4469 = vsel %vm1894, %v4328, 0
  %v4472 = vsel %vm1894, %v4333, 0
  %v4475 = vsel %vm1894, %v4338, 0
  %v4478 = vsel %vm1894, %v4343, 0
  %v4481 = vsel %vm1894, %v4348, 0
  %v4484 = vsel %vm1894, %v4353, 0
  %v4487 = vsel %vm1894, %v4358, 0
  %v4490 = vsel %vm1894, %v4363, 0
  %v4493 = vsel %vm1894, %v4368, 0
  %v4496 = vsel %vm1894, %v4373, 0
  %v4499 = vsel %vm1894, %v4378, 0
  %v4502 = vsel %vm1894, %v4383, 0
  %v4505 = vsel %vm1894, %v4388, 0
  %v4508 = vsel %vm1894, %v4393, 0
  %v4511 = vsel %vm1894, %v4398, 0
  %v4514 = vsel %vm1894, %v4403, 0
  %4516 = vmatprep.subr.mxu0 0.0
  %4517 = vmatpush1.msra.mxu0 0.0
  %4518 = vmatprep.subr.mxu0 0.0
  %4519 = vmatpush1.msra.mxu0 0.0
  %4520 = vmatprep.subr.mxu0 0.0
  %4521 = vmatpush1.msra.mxu0 0.0
  %4522 = vmatprep.subr.mxu0 0.0
  %4523 = vmatpush1.msra.mxu0 0.0
  %4524 = vmatprep.subr.mxu0 0.0
  %4525 = vmatpush1.msra.mxu0 0.0
  %4526 = vmatprep.subr.mxu0 0.0
  %4527 = vmatpush1.msra.mxu0 0.0
  %4528 = vmatprep.subr.mxu0 0.0
  %4529 = vmatpush1.msra.mxu0 0.0
  %4530 = vmatprep.subr.mxu0 0.0
  %4531 = vmatpush1.msra.mxu0 0.0
  %4532 = vmatprep.subr.mxu0 0.0
  %4533 = vmatpush1.msra.mxu0 0.0
  %4534 = vmatprep.subr.mxu0 0.0
  %4535 = vmatpush1.msra.mxu0 0.0
  %4536 = vmatprep.subr.mxu0 0.0
  %4537 = vmatpush1.msra.mxu0 0.0
  %4538 = vmatprep.subr.mxu0 0.0
  %4539 = vmatpush1.msra.mxu0 0.0
  %4540 = vmatprep.subr.mxu0 0.0
  %4541 = vmatpush1.msra.mxu0 0.0
  %4542 = vmatprep.subr.mxu0 0.0
  %4543 = vmatpush1.msra.mxu0 0.0
  %4544 = vmatprep.subr.mxu0 0.0
  %4545 = vmatpush1.msra.mxu0 0.0
  %4546 = vmatprep.subr.mxu0 0.0
  %4547 = vmatpush1.msra.mxu0 %v4407
  %4548 = vmatprep.subr.mxu0 0.0
  %4549 = vmatpush2.msra.mxu0 0.0
  %4550 = vmatprep.subr.mxu0 0.0
  %4551 = vmatpush2.msra.mxu0 0.0
  %4552 = vmatprep.subr.mxu0 0.0
  %4553 = vmatpush2.msra.mxu0 0.0
  %4554 = vmatprep.subr.mxu0 0.0
  %4555 = vmatpush2.msra.mxu0 0.0
  %4556 = vmatprep.subr.mxu0 0.0
  %4557 = vmatpush2.msra.mxu0 0.0
  %4558 = vmatprep.subr.mxu0 0.0
  %4559 = vmatpush2.msra.mxu0 0.0
  %4560 = vmatprep.subr.mxu0 0.0
  %4561 = vmatpush2.msra.mxu0 0.0
  %4562 = vmatprep.subr.mxu0 0.0
  %4563 = vmatpush2.msra.mxu0 0.0
  %4564 = vmatprep.subr.mxu0 0.0
  %4565 = vmatpush2.msra.mxu0 0.0
  %4566 = vmatprep.subr.mxu0 0.0
  %4567 = vmatpush2.msra.mxu0 0.0
  %4568 = vmatprep.subr.mxu0 0.0
  %4569 = vmatpush2.msra.mxu0 0.0
  %4570 = vmatprep.subr.mxu0 0.0
  %4571 = vmatpush2.msra.mxu0 0.0
  %4572 = vmatprep.subr.mxu0 0.0
  %4573 = vmatpush2.msra.mxu0 0.0
  %4574 = vmatprep.subr.mxu0 0.0
  %4575 = vmatpush2.msra.mxu0 0.0
  %4576 = vmatprep.subr.mxu0 0.0
  %4577 = vmatpush2.msra.mxu0 0.0
  %4578 = vmatprep.subr.mxu0 0.0
  %4579 = vmatpush2.msra.mxu0 0.0
  %4580 = vmatprep.mubr.f32.mxu0 0.0
  %4581 = vmatmul.mubr.f32.gmra.mxu0 %v4409
  %v4582 = vpop.f32.mrf.mxu0
  %v4583 = vadd.f32 0.0, %v4582
  %v4584 = vpop.f32.mrf.mxu0
  %4585 = vmatprep.mubr.f32.mxu0 0.0
  %4586 = vmatmul.mubr.f32.gmra.mxu0 %v4412
  %v4587 = vpop.f32.mrf.mxu0
  %v4588 = vadd.f32 0.0, %v4587
  %v4589 = vpop.f32.mrf.mxu0
  %4590 = vmatprep.mubr.f32.mxu0 0.0
  %4591 = vmatmul.mubr.f32.gmra.mxu0 %v4415
  %v4592 = vpop.f32.mrf.mxu0
  %v4593 = vadd.f32 0.0, %v4592
  %v4594 = vpop.f32.mrf.mxu0
  %4595 = vmatprep.mubr.f32.mxu0 0.0
  %4596 = vmatmul.mubr.f32.gmra.mxu0 %v4418
  %v4597 = vpop.f32.mrf.mxu0
  %v4598 = vadd.f32 0.0, %v4597
  %v4599 = vpop.f32.mrf.mxu0
  %4600 = vmatprep.mubr.f32.mxu0 0.0
  %4601 = vmatmul.mubr.f32.gmra.mxu0 %v4421
  %v4602 = vpop.f32.mrf.mxu0
  %v4603 = vadd.f32 0.0, %v4602
  %v4604 = vpop.f32.mrf.mxu0
  %4605 = vmatprep.mubr.f32.mxu0 0.0
  %4606 = vmatmul.mubr.f32.gmra.mxu0 %v4424
  %v4607 = vpop.f32.mrf.mxu0
  %v4608 = vadd.f32 0.0, %v4607
  %v4609 = vpop.f32.mrf.mxu0
  %4610 = vmatprep.mubr.f32.mxu0 0.0
  %4611 = vmatmul.mubr.f32.gmra.mxu0 %v4427
  %v4612 = vpop.f32.mrf.mxu0
  %v4613 = vadd.f32 0.0, %v4612
  %v4614 = vpop.f32.mrf.mxu0
  %4615 = vmatprep.mubr.f32.mxu0 0.0
  %4616 = vmatmul.mubr.f32.gmra.mxu0 %v4430
  %v4617 = vpop.f32.mrf.mxu0
  %v4618 = vadd.f32 0.0, %v4617
  %v4619 = vpop.f32.mrf.mxu0
  %4620 = vmatprep.mubr.f32.mxu0 0.0
  %4621 = vmatmul.mubr.f32.gmra.mxu0 %v4433
  %v4622 = vpop.f32.mrf.mxu0
  %v4623 = vadd.f32 0.0, %v4622
  %v4624 = vpop.f32.mrf.mxu0
  %4625 = vmatprep.mubr.f32.mxu0 0.0
  %4626 = vmatmul.mubr.f32.gmra.mxu0 %v4436
  %v4627 = vpop.f32.mrf.mxu0
  %v4628 = vadd.f32 0.0, %v4627
  %v4629 = vpop.f32.mrf.mxu0
  %4630 = vmatprep.mubr.f32.mxu0 0.0
  %4631 = vmatmul.mubr.f32.gmra.mxu0 %v4439
  %v4632 = vpop.f32.mrf.mxu0
  %v4633 = vadd.f32 0.0, %v4632
  %v4634 = vpop.f32.mrf.mxu0
  %4635 = vmatprep.mubr.f32.mxu0 0.0
  %4636 = vmatmul.mubr.f32.gmra.mxu0 %v4442
  %v4637 = vpop.f32.mrf.mxu0
  %v4638 = vadd.f32 0.0, %v4637
  %v4639 = vpop.f32.mrf.mxu0
  %4640 = vmatprep.mubr.f32.mxu0 0.0
  %4641 = vmatmul.mubr.f32.gmra.mxu0 %v4445
  %v4642 = vpop.f32.mrf.mxu0
  %v4643 = vadd.f32 0.0, %v4642
  %v4644 = vpop.f32.mrf.mxu0
  %4645 = vmatprep.mubr.f32.mxu0 0.0
  %4646 = vmatmul.mubr.f32.gmra.mxu0 %v4448
  %v4647 = vpop.f32.mrf.mxu0
  %v4648 = vadd.f32 0.0, %v4647
  %v4649 = vpop.f32.mrf.mxu0
  %4650 = vmatprep.mubr.f32.mxu0 0.0
  %4651 = vmatmul.mubr.f32.gmra.mxu0 %v4451
  %v4652 = vpop.f32.mrf.mxu0
  %v4653 = vadd.f32 0.0, %v4652
  %v4654 = vpop.f32.mrf.mxu0
  %4655 = vmatprep.mubr.f32.mxu0 0.0
  %4656 = vmatmul.mubr.f32.gmra.mxu0 %v4454
  %v4657 = vpop.f32.mrf.mxu0
  %v4658 = vadd.f32 0.0, %v4657
  %v4659 = vpop.f32.mrf.mxu0
  %4660 = vmatprep.mubr.f32.mxu0 0.0
  %4661 = vmatmul.mubr.f32.gmra.mxu0 %v4457
  %v4662 = vpop.f32.mrf.mxu0
  %v4663 = vadd.f32 0.0, %v4662
  %v4664 = vpop.f32.mrf.mxu0
  %4665 = vmatprep.mubr.f32.mxu0 0.0
  %4666 = vmatmul.mubr.f32.gmra.mxu0 %v4460
  %v4667 = vpop.f32.mrf.mxu0
  %v4668 = vadd.f32 0.0, %v4667
  %v4669 = vpop.f32.mrf.mxu0
  %4670 = vmatprep.mubr.f32.mxu0 0.0
  %4671 = vmatmul.mubr.f32.gmra.mxu0 %v4463
  %v4672 = vpop.f32.mrf.mxu0
  %v4673 = vadd.f32 0.0, %v4672
  %v4674 = vpop.f32.mrf.mxu0
  %4675 = vmatprep.mubr.f32.mxu0 0.0
  %4676 = vmatmul.mubr.f32.gmra.mxu0 %v4466
  %v4677 = vpop.f32.mrf.mxu0
  %v4678 = vadd.f32 0.0, %v4677
  %v4679 = vpop.f32.mrf.mxu0
  %4680 = vmatprep.mubr.f32.mxu0 0.0
  %4681 = vmatmul.mubr.f32.gmra.mxu0 %v4469
  %v4682 = vpop.f32.mrf.mxu0
  %v4683 = vadd.f32 0.0, %v4682
  %v4684 = vpop.f32.mrf.mxu0
  %4685 = vmatprep.mubr.f32.mxu0 0.0
  %4686 = vmatmul.mubr.f32.gmra.mxu0 %v4472
  %v4687 = vpop.f32.mrf.mxu0
  %v4688 = vadd.f32 0.0, %v4687
  %v4689 = vpop.f32.mrf.mxu0
  %4690 = vmatprep.mubr.f32.mxu0 0.0
  %4691 = vmatmul.mubr.f32.gmra.mxu0 %v4475
  %v4692 = vpop.f32.mrf.mxu0
  %v4693 = vadd.f32 0.0, %v4692
  %v4694 = vpop.f32.mrf.mxu0
  %4695 = vmatprep.mubr.f32.mxu0 0.0
  %4696 = vmatmul.mubr.f32.gmra.mxu0 %v4478
  %v4697 = vpop.f32.mrf.mxu0
  %v4698 = vadd.f32 0.0, %v4697
  %v4699 = vpop.f32.mrf.mxu0
  %4700 = vmatprep.mubr.f32.mxu0 0.0
  %4701 = vmatmul.mubr.f32.gmra.mxu0 %v4481
  %v4702 = vpop.f32.mrf.mxu0
  %v4703 = vadd.f32 0.0, %v4702
  %v4704 = vpop.f32.mrf.mxu0
  %4705 = vmatprep.mubr.f32.mxu0 0.0
  %4706 = vmatmul.mubr.f32.gmra.mxu0 %v4484
  %v4707 = vpop.f32.mrf.mxu0
  %v4708 = vadd.f32 0.0, %v4707
  %v4709 = vpop.f32.mrf.mxu0
  %4710 = vmatprep.mubr.f32.mxu0 0.0
  %4711 = vmatmul.mubr.f32.gmra.mxu0 %v4487
  %v4712 = vpop.f32.mrf.mxu0
  %v4713 = vadd.f32 0.0, %v4712
  %v4714 = vpop.f32.mrf.mxu0
  %4715 = vmatprep.mubr.f32.mxu0 0.0
  %4716 = vmatmul.mubr.f32.gmra.mxu0 %v4490
  %v4717 = vpop.f32.mrf.mxu0
  %v4718 = vadd.f32 0.0, %v4717
  %v4719 = vpop.f32.mrf.mxu0
  %4720 = vmatprep.mubr.f32.mxu0 0.0
  %4721 = vmatmul.mubr.f32.gmra.mxu0 %v4493
  %v4722 = vpop.f32.mrf.mxu0
  %v4723 = vadd.f32 0.0, %v4722
  %v4724 = vpop.f32.mrf.mxu0
  %4725 = vmatprep.mubr.f32.mxu0 0.0
  %4726 = vmatmul.mubr.f32.gmra.mxu0 %v4496
  %v4727 = vpop.f32.mrf.mxu0
  %v4728 = vadd.f32 0.0, %v4727
  %v4729 = vpop.f32.mrf.mxu0
  %4730 = vmatprep.mubr.f32.mxu0 0.0
  %4731 = vmatmul.mubr.f32.gmra.mxu0 %v4499
  %v4732 = vpop.f32.mrf.mxu0
  %v4733 = vadd.f32 0.0, %v4732
  %v4734 = vpop.f32.mrf.mxu0
  %4735 = vmatprep.mubr.f32.mxu0 0.0
  %4736 = vmatmul.mubr.f32.gmra.mxu0 %v4502
  %v4737 = vpop.f32.mrf.mxu0
  %v4738 = vadd.f32 0.0, %v4737
  %v4739 = vpop.f32.mrf.mxu0
  %4740 = vmatprep.mubr.f32.mxu0 0.0
  %4741 = vmatmul.mubr.f32.gmra.mxu0 %v4505
  %v4742 = vpop.f32.mrf.mxu0
  %v4743 = vadd.f32 0.0, %v4742
  %v4744 = vpop.f32.mrf.mxu0
  %4745 = vmatprep.mubr.f32.mxu0 0.0
  %4746 = vmatmul.mubr.f32.gmra.mxu0 %v4508
  %v4747 = vpop.f32.mrf.mxu0
  %v4748 = vadd.f32 0.0, %v4747
  %v4749 = vpop.f32.mrf.mxu0
  %4750 = vmatprep.mubr.f32.mxu0 0.0
  %4751 = vmatmul.mubr.f32.gmra.mxu0 %v4511
  %v4752 = vpop.f32.mrf.mxu0
  %v4753 = vadd.f32 0.0, %v4752
  %v4754 = vpop.f32.mrf.mxu0
  %4755 = vmatprep.mubr.f32.mxu0 0.0
  %4756 = vmatmul.mubr.f32.gmra.mxu0 %v4514
  %v4757 = vpop.f32.mrf.mxu0
  %v4758 = vadd.f32 0.0, %v4757
  %v4759 = vpop.f32.mrf.mxu0
  %4760 = vdwg.mxu0
  %v4761 = vadd.f32 %v3663, %v4583
  %v4762 = vadd.f32 %v3664, %v4588
  %v4763 = vadd.f32 %v3665, %v4593
  %v4764 = vadd.f32 %v3666, %v4598
  %v4765 = vadd.f32 %v3667, %v4603
  %v4766 = vadd.f32 %v3668, %v4608
  %v4767 = vadd.f32 %v3669, %v4613
  %v4768 = vadd.f32 %v3670, %v4618
  %v4769 = vadd.f32 %v3671, %v4623
  %v4770 = vadd.f32 %v3672, %v4628
  %v4771 = vadd.f32 %v3673, %v4633
  %v4772 = vadd.f32 %v3674, %v4638
  %v4773 = vadd.f32 %v3675, %v4643
  %v4774 = vadd.f32 %v3676, %v4648
  %v4775 = vadd.f32 %v3677, %v4653
  %v4776 = vadd.f32 %v3678, %v4658
  %v4777 = vadd.f32 %v3679, %v4663
  %v4778 = vadd.f32 %v3680, %v4668
  %v4779 = vadd.f32 %v3681, %v4673
  %v4780 = vadd.f32 %v3682, %v4678
  %v4781 = vadd.f32 %v3683, %v4683
  %v4782 = vadd.f32 %v3684, %v4688
  %v4783 = vadd.f32 %v3685, %v4693
  %v4784 = vadd.f32 %v3686, %v4698
  %v4785 = vadd.f32 %v3687, %v4703
  %v4786 = vadd.f32 %v3688, %v4708
  %v4787 = vadd.f32 %v3689, %v4713
  %v4788 = vadd.f32 %v3690, %v4718
  %v4789 = vadd.f32 %v3691, %v4723
  %v4790 = vadd.f32 %v3692, %v4728
  %v4791 = vadd.f32 %v3693, %v4733
  %v4792 = vadd.f32 %v3694, %v4738
  %v4793 = vadd.f32 %v3695, %v4743
  %v4794 = vadd.f32 %v3696, %v4748
  %v4795 = vadd.f32 %v3697, %v4753
  %v4796 = vadd.f32 %v3698, %v4758
  %s4797 = scalar_lea.vmem %s3, 3456
  %v4798 = vld [vmem:[%s4797] sm:$0xff]
  %v4799 = vld [vmem:[%s4797 + $0x8] sm:$0xff]
  %v4800 = vld [vmem:[%s4797 + $0x10] sm:$0xff]
  %v4801 = vld [vmem:[%s4797 + $0x18] sm:$0xff]
  %v4802 = vld [vmem:[%s4797 + $0x20] sm:$0xff]
  %v4803 = vld [vmem:[%s4797 + $0x28] sm:$0xff]
  %v4804 = vld [vmem:[%s4797 + $0x30] sm:$0xff]
  %v4805 = vld [vmem:[%s4797 + $0x38] sm:$0xff]
  %v4806 = vld [vmem:[%s4797 + $0x40] sm:$0xff]
  %v4807 = vld [vmem:[%s4797 + $0x48] sm:$0xff]
  %v4808 = vld [vmem:[%s4797 + $0x50] sm:$0xff]
  %v4809 = vld [vmem:[%s4797 + $0x58] sm:$0xff]
  %v4810 = vld [vmem:[%s4797 + $0x60] sm:$0xff]
  %v4811 = vld [vmem:[%s4797 + $0x68] sm:$0xff]
  %v4812 = vld [vmem:[%s4797 + $0x70] sm:$0xff]
  %v4813 = vld [vmem:[%s4797 + $0x78] sm:$0xff]
  %v4814 = vld [vmem:[%s4797 + $0x80] sm:$0xff]
  %v4815 = vld [vmem:[%s4797 + $0x88] sm:$0xff]
  %v4816 = vld [vmem:[%s4797 + $0x90] sm:$0xff]
  %v4817 = vld [vmem:[%s4797 + $0x98] sm:$0xff]
  %v4818 = vld [vmem:[%s4797 + $0xa0] sm:$0xff]
  %v4819 = vld [vmem:[%s4797 + $0xa8] sm:$0xff]
  %v4820 = vld [vmem:[%s4797 + $0xb0] sm:$0xff]
  %v4821 = vld [vmem:[%s4797 + $0xb8] sm:$0xff]
  %v4822 = vld [vmem:[%s4797 + $0xc0] sm:$0xff]
  %v4823 = vld [vmem:[%s4797 + $0xc8] sm:$0xff]
  %v4824 = vld [vmem:[%s4797 + $0xd0] sm:$0xff]
  %v4825 = vld [vmem:[%s4797 + $0xd8] sm:$0xff]
  %v4826 = vld [vmem:[%s4797 + $0xe0] sm:$0xff]
  %v4827 = vld [vmem:[%s4797 + $0xe8] sm:$0xff]
  %v4828 = vld [vmem:[%s4797 + $0xf0] sm:$0xff]
  %v4829 = vld [vmem:[%s4797 + $0xf8] sm:$0xff]
  %v4830 = vld [vmem:[%s4797 + $0x100] sm:$0xff]
  %v4831 = vld [vmem:[%s4797 + $0x108] sm:$0xff]
  %v4832 = vld [vmem:[%s4797 + $0x110] sm:$0xff]
  %v4833 = vld [vmem:[%s4797 + $0x118] sm:$0xff]
  %v4834 = vld [vmem:[%s4797 + $0x120] sm:$0xff]
  %v4835 = vld [vmem:[%s4797 + $0x128] sm:$0xff]
  %v4836 = vld [vmem:[%s4797 + $0x130] sm:$0xff]
  %v4837 = vld [vmem:[%s4797 + $0x138] sm:$0xff]
  %v4838 = vld [vmem:[%s4797 + $0x140] sm:$0xff]
  %v4839 = vld [vmem:[%s4797 + $0x148] sm:$0xff]
  %v4840 = vld [vmem:[%s4797 + $0x150] sm:$0xff]
  %v4841 = vld [vmem:[%s4797 + $0x158] sm:$0xff]
  %v4842 = vld [vmem:[%s4797 + $0x160] sm:$0xff]
  %v4843 = vld [vmem:[%s4797 + $0x168] sm:$0xff]
  %v4844 = vld [vmem:[%s4797 + $0x170] sm:$0xff]
  %v4845 = vld [vmem:[%s4797 + $0x178] sm:$0xff]
  %v4846 = vld [vmem:[%s4797 + $0x180] sm:$0xff]
  %v4847 = vld [vmem:[%s4797 + $0x188] sm:$0xff]
  %v4848 = vld [vmem:[%s4797 + $0x190] sm:$0xff]
  %v4849 = vld [vmem:[%s4797 + $0x198] sm:$0xff]
  %v4850 = vld [vmem:[%s4797 + $0x1a0] sm:$0xff]
  %v4851 = vld [vmem:[%s4797 + $0x1a8] sm:$0xff]
  %v4852 = vld [vmem:[%s4797 + $0x1b0] sm:$0xff]
  %v4853 = vld [vmem:[%s4797 + $0x1b8] sm:$0xff]
  %v4854 = vld [vmem:[%s4797 + $0x1c0] sm:$0xff]
  %v4855 = vld [vmem:[%s4797 + $0x1c8] sm:$0xff]
  %v4856 = vld [vmem:[%s4797 + $0x1d0] sm:$0xff]
  %v4857 = vld [vmem:[%s4797 + $0x1d8] sm:$0xff]
  %v4858 = vld [vmem:[%s4797 + $0x1e0] sm:$0xff]
  %v4859 = vld [vmem:[%s4797 + $0x1e8] sm:$0xff]
  %v4860 = vld [vmem:[%s4797 + $0x1f0] sm:$0xff]
  %v4861 = vld [vmem:[%s4797 + $0x1f8] sm:$0xff]
  %v4862 = vld [vmem:[%s4797 + $0x200] sm:$0xff]
  %v4863 = vld [vmem:[%s4797 + $0x208] sm:$0xff]
  %v4864 = vld [vmem:[%s4797 + $0x210] sm:$0xff]
  %v4865 = vld [vmem:[%s4797 + $0x218] sm:$0xff]
  %v4866 = vld [vmem:[%s4797 + $0x220] sm:$0xff]
  %v4867 = vld [vmem:[%s4797 + $0x228] sm:$0xff]
  %v4868 = vld [vmem:[%s4797 + $0x230] sm:$0xff]
  %v4869 = vld [vmem:[%s4797 + $0x238] sm:$0xff]
  %v4870 = vld [vmem:[%s4797 + $0x240] sm:$0xff]
  %v4871 = vld [vmem:[%s4797 + $0x248] sm:$0xff]
  %v4872 = vld [vmem:[%s4797 + $0x250] sm:$0xff]
  %v4873 = vld [vmem:[%s4797 + $0x258] sm:$0xff]
  %v4874 = vld [vmem:[%s4797 + $0x260] sm:$0xff]
  %v4875 = vld [vmem:[%s4797 + $0x268] sm:$0xff]
  %v4876 = vld [vmem:[%s4797 + $0x270] sm:$0xff]
  %v4877 = vld [vmem:[%s4797 + $0x278] sm:$0xff]
  %v4878 = vld [vmem:[%s4797 + $0x280] sm:$0xff]
  %v4879 = vld [vmem:[%s4797 + $0x288] sm:$0xff]
  %v4880 = vld [vmem:[%s4797 + $0x290] sm:$0xff]
  %v4881 = vld [vmem:[%s4797 + $0x298] sm:$0xff]
  %v4882 = vld [vmem:[%s4797 + $0x2a0] sm:$0xff]
  %v4883 = vld [vmem:[%s4797 + $0x2a8] sm:$0xff]
  %v4884 = vld [vmem:[%s4797 + $0x2b0] sm:$0xff]
  %v4885 = vld [vmem:[%s4797 + $0x2b8] sm:$0xff]
  %v4886 = vld [vmem:[%s4797 + $0x2c0] sm:$0xff]
  %v4887 = vld [vmem:[%s4797 + $0x2c8] sm:$0xff]
  %v4888 = vld [vmem:[%s4797 + $0x2d0] sm:$0xff]
  %v4889 = vld [vmem:[%s4797 + $0x2d8] sm:$0xff]
  %v4890 = vld [vmem:[%s4797 + $0x2e0] sm:$0xff]
  %v4891 = vld [vmem:[%s4797 + $0x2e8] sm:$0xff]
  %v4892 = vld [vmem:[%s4797 + $0x2f0] sm:$0xff]
  %v4893 = vld [vmem:[%s4797 + $0x2f8] sm:$0xff]
  %v4894 = vld [vmem:[%s4797 + $0x300] sm:$0xff]
  %v4895 = vld [vmem:[%s4797 + $0x308] sm:$0xff]
  %v4896 = vld [vmem:[%s4797 + $0x310] sm:$0xff]
  %v4897 = vld [vmem:[%s4797 + $0x318] sm:$0xff]
  %v4898 = vld [vmem:[%s4797 + $0x320] sm:$0xff]
  %v4899 = vld [vmem:[%s4797 + $0x328] sm:$0xff]
  %v4900 = vld [vmem:[%s4797 + $0x330] sm:$0xff]
  %v4901 = vld [vmem:[%s4797 + $0x338] sm:$0xff]
  %v4902 = vld [vmem:[%s4797 + $0x340] sm:$0xff]
  %v4903 = vld [vmem:[%s4797 + $0x348] sm:$0xff]
  %v4904 = vld [vmem:[%s4797 + $0x350] sm:$0xff]
  %v4905 = vld [vmem:[%s4797 + $0x358] sm:$0xff]
  %v4907 = vsel %vm88, %v4800, 0
  %v4910 = vsel %vm88, %v4803, 0
  %v4913 = vsel %vm88, %v4806, 0
  %v4916 = vsel %vm88, %v4809, 0
  %v4919 = vsel %vm88, %v4812, 0
  %v4922 = vsel %vm88, %v4815, 0
  %v4925 = vsel %vm88, %v4818, 0
  %v4928 = vsel %vm88, %v4821, 0
  %v4931 = vsel %vm88, %v4824, 0
  %v4934 = vsel %vm88, %v4827, 0
  %v4937 = vsel %vm88, %v4830, 0
  %v4940 = vsel %vm88, %v4833, 0
  %v4943 = vsel %vm88, %v4836, 0
  %v4946 = vsel %vm88, %v4839, 0
  %v4949 = vsel %vm88, %v4842, 0
  %v4952 = vsel %vm88, %v4845, 0
  %v4955 = vsel %vm88, %v4848, 0
  %v4958 = vsel %vm88, %v4851, 0
  %v4961 = vsel %vm88, %v4854, 0
  %v4964 = vsel %vm88, %v4857, 0
  %v4967 = vsel %vm88, %v4860, 0
  %v4970 = vsel %vm88, %v4863, 0
  %v4973 = vsel %vm88, %v4866, 0
  %v4976 = vsel %vm88, %v4869, 0
  %v4979 = vsel %vm88, %v4872, 0
  %v4982 = vsel %vm88, %v4875, 0
  %v4985 = vsel %vm88, %v4878, 0
  %v4988 = vsel %vm88, %v4881, 0
  %v4991 = vsel %vm88, %v4884, 0
  %v4994 = vsel %vm88, %v4887, 0
  %v4997 = vsel %vm88, %v4890, 0
  %v5000 = vsel %vm88, %v4893, 0
  %v5003 = vsel %vm88, %v4896, 0
  %v5006 = vsel %vm88, %v4899, 0
  %v5009 = vsel %vm88, %v4902, 0
  %v5012 = vsel %vm88, %v4905, 0
  %5014 = vmatprep.subr.mxu0 0.0
  %5015 = vmatpush1.msra.mxu0 %v457
  %5016 = vmatprep.subr.mxu0 0.0
  %5017 = vmatpush1.msra.mxu0 %v456
  %5018 = vmatprep.subr.mxu0 0.0
  %5019 = vmatpush1.msra.mxu0 %v455
  %5020 = vmatprep.subr.mxu0 0.0
  %5021 = vmatpush1.msra.mxu0 %v454
  %5022 = vmatprep.subr.mxu0 0.0
  %5023 = vmatpush1.msra.mxu0 %v453
  %5024 = vmatprep.subr.mxu0 0.0
  %5025 = vmatpush1.msra.mxu0 %v452
  %5026 = vmatprep.subr.mxu0 0.0
  %5027 = vmatpush1.msra.mxu0 %v451
  %5028 = vmatprep.subr.mxu0 0.0
  %5029 = vmatpush1.msra.mxu0 %v450
  %5030 = vmatprep.subr.mxu0 0.0
  %5031 = vmatpush1.msra.mxu0 %v449
  %5032 = vmatprep.subr.mxu0 0.0
  %5033 = vmatpush1.msra.mxu0 %v448
  %5034 = vmatprep.subr.mxu0 0.0
  %5035 = vmatpush1.msra.mxu0 %v447
  %5036 = vmatprep.subr.mxu0 0.0
  %5037 = vmatpush1.msra.mxu0 %v446
  %5038 = vmatprep.subr.mxu0 0.0
  %5039 = vmatpush1.msra.mxu0 %v445
  %5040 = vmatprep.subr.mxu0 0.0
  %5041 = vmatpush1.msra.mxu0 %v444
  %5042 = vmatprep.subr.mxu0 0.0
  %5043 = vmatpush1.msra.mxu0 %v443
  %5044 = vmatprep.subr.mxu0 0.0
  %5045 = vmatpush1.msra.mxu0 %v442
  %5046 = vmatprep.subr.mxu0 0.0
  %5047 = vmatpush2.msra.mxu0 %v473
  %5048 = vmatprep.subr.mxu0 0.0
  %5049 = vmatpush2.msra.mxu0 %v472
  %5050 = vmatprep.subr.mxu0 0.0
  %5051 = vmatpush2.msra.mxu0 %v471
  %5052 = vmatprep.subr.mxu0 0.0
  %5053 = vmatpush2.msra.mxu0 %v470
  %5054 = vmatprep.subr.mxu0 0.0
  %5055 = vmatpush2.msra.mxu0 %v469
  %5056 = vmatprep.subr.mxu0 0.0
  %5057 = vmatpush2.msra.mxu0 %v468
  %5058 = vmatprep.subr.mxu0 0.0
  %5059 = vmatpush2.msra.mxu0 %v467
  %5060 = vmatprep.subr.mxu0 0.0
  %5061 = vmatpush2.msra.mxu0 %v466
  %5062 = vmatprep.subr.mxu0 0.0
  %5063 = vmatpush2.msra.mxu0 %v465
  %5064 = vmatprep.subr.mxu0 0.0
  %5065 = vmatpush2.msra.mxu0 %v464
  %5066 = vmatprep.subr.mxu0 0.0
  %5067 = vmatpush2.msra.mxu0 %v463
  %5068 = vmatprep.subr.mxu0 0.0
  %5069 = vmatpush2.msra.mxu0 %v462
  %5070 = vmatprep.subr.mxu0 0.0
  %5071 = vmatpush2.msra.mxu0 %v461
  %5072 = vmatprep.subr.mxu0 0.0
  %5073 = vmatpush2.msra.mxu0 %v460
  %5074 = vmatprep.subr.mxu0 0.0
  %5075 = vmatpush2.msra.mxu0 %v459
  %5076 = vmatprep.subr.mxu0 0.0
  %5077 = vmatpush2.msra.mxu0 %v458
  %5078 = vmatprep.mubr.f32.mxu0 %v4799
  %5079 = vmatmul.mubr.f32.gmra.mxu0 %v4798
  %v5080 = vpop.f32.mrf.mxu0
  %v5081 = vadd.f32 0.0, %v5080
  %v5082 = vpop.f32.mrf.mxu0
  %5083 = vmatprep.mubr.f32.mxu0 %v4802
  %5084 = vmatmul.mubr.f32.gmra.mxu0 %v4801
  %v5085 = vpop.f32.mrf.mxu0
  %v5086 = vadd.f32 0.0, %v5085
  %v5087 = vpop.f32.mrf.mxu0
  %5088 = vmatprep.mubr.f32.mxu0 %v4805
  %5089 = vmatmul.mubr.f32.gmra.mxu0 %v4804
  %v5090 = vpop.f32.mrf.mxu0
  %v5091 = vadd.f32 0.0, %v5090
  %v5092 = vpop.f32.mrf.mxu0
  %5093 = vmatprep.mubr.f32.mxu0 %v4808
  %5094 = vmatmul.mubr.f32.gmra.mxu0 %v4807
  %v5095 = vpop.f32.mrf.mxu0
  %v5096 = vadd.f32 0.0, %v5095
  %v5097 = vpop.f32.mrf.mxu0
  %5098 = vmatprep.mubr.f32.mxu0 %v4811
  %5099 = vmatmul.mubr.f32.gmra.mxu0 %v4810
  %v5100 = vpop.f32.mrf.mxu0
  %v5101 = vadd.f32 0.0, %v5100
  %v5102 = vpop.f32.mrf.mxu0
  %5103 = vmatprep.mubr.f32.mxu0 %v4814
  %5104 = vmatmul.mubr.f32.gmra.mxu0 %v4813
  %v5105 = vpop.f32.mrf.mxu0
  %v5106 = vadd.f32 0.0, %v5105
  %v5107 = vpop.f32.mrf.mxu0
  %5108 = vmatprep.mubr.f32.mxu0 %v4817
  %5109 = vmatmul.mubr.f32.gmra.mxu0 %v4816
  %v5110 = vpop.f32.mrf.mxu0
  %v5111 = vadd.f32 0.0, %v5110
  %v5112 = vpop.f32.mrf.mxu0
  %5113 = vmatprep.mubr.f32.mxu0 %v4820
  %5114 = vmatmul.mubr.f32.gmra.mxu0 %v4819
  %v5115 = vpop.f32.mrf.mxu0
  %v5116 = vadd.f32 0.0, %v5115
  %v5117 = vpop.f32.mrf.mxu0
  %5118 = vmatprep.mubr.f32.mxu0 %v4823
  %5119 = vmatmul.mubr.f32.gmra.mxu0 %v4822
  %v5120 = vpop.f32.mrf.mxu0
  %v5121 = vadd.f32 0.0, %v5120
  %v5122 = vpop.f32.mrf.mxu0
  %5123 = vmatprep.mubr.f32.mxu0 %v4826
  %5124 = vmatmul.mubr.f32.gmra.mxu0 %v4825
  %v5125 = vpop.f32.mrf.mxu0
  %v5126 = vadd.f32 0.0, %v5125
  %v5127 = vpop.f32.mrf.mxu0
  %5128 = vmatprep.mubr.f32.mxu0 %v4829
  %5129 = vmatmul.mubr.f32.gmra.mxu0 %v4828
  %v5130 = vpop.f32.mrf.mxu0
  %v5131 = vadd.f32 0.0, %v5130
  %v5132 = vpop.f32.mrf.mxu0
  %5133 = vmatprep.mubr.f32.mxu0 %v4832
  %5134 = vmatmul.mubr.f32.gmra.mxu0 %v4831
  %v5135 = vpop.f32.mrf.mxu0
  %v5136 = vadd.f32 0.0, %v5135
  %v5137 = vpop.f32.mrf.mxu0
  %5138 = vmatprep.mubr.f32.mxu0 %v4835
  %5139 = vmatmul.mubr.f32.gmra.mxu0 %v4834
  %v5140 = vpop.f32.mrf.mxu0
  %v5141 = vadd.f32 0.0, %v5140
  %v5142 = vpop.f32.mrf.mxu0
  %5143 = vmatprep.mubr.f32.mxu0 %v4838
  %5144 = vmatmul.mubr.f32.gmra.mxu0 %v4837
  %v5145 = vpop.f32.mrf.mxu0
  %v5146 = vadd.f32 0.0, %v5145
  %v5147 = vpop.f32.mrf.mxu0
  %5148 = vmatprep.mubr.f32.mxu0 %v4841
  %5149 = vmatmul.mubr.f32.gmra.mxu0 %v4840
  %v5150 = vpop.f32.mrf.mxu0
  %v5151 = vadd.f32 0.0, %v5150
  %v5152 = vpop.f32.mrf.mxu0
  %5153 = vmatprep.mubr.f32.mxu0 %v4844
  %5154 = vmatmul.mubr.f32.gmra.mxu0 %v4843
  %v5155 = vpop.f32.mrf.mxu0
  %v5156 = vadd.f32 0.0, %v5155
  %v5157 = vpop.f32.mrf.mxu0
  %5158 = vmatprep.mubr.f32.mxu0 %v4847
  %5159 = vmatmul.mubr.f32.gmra.mxu0 %v4846
  %v5160 = vpop.f32.mrf.mxu0
  %v5161 = vadd.f32 0.0, %v5160
  %v5162 = vpop.f32.mrf.mxu0
  %5163 = vmatprep.mubr.f32.mxu0 %v4850
  %5164 = vmatmul.mubr.f32.gmra.mxu0 %v4849
  %v5165 = vpop.f32.mrf.mxu0
  %v5166 = vadd.f32 0.0, %v5165
  %v5167 = vpop.f32.mrf.mxu0
  %5168 = vmatprep.mubr.f32.mxu0 %v4853
  %5169 = vmatmul.mubr.f32.gmra.mxu0 %v4852
  %v5170 = vpop.f32.mrf.mxu0
  %v5171 = vadd.f32 0.0, %v5170
  %v5172 = vpop.f32.mrf.mxu0
  %5173 = vmatprep.mubr.f32.mxu0 %v4856
  %5174 = vmatmul.mubr.f32.gmra.mxu0 %v4855
  %v5175 = vpop.f32.mrf.mxu0
  %v5176 = vadd.f32 0.0, %v5175
  %v5177 = vpop.f32.mrf.mxu0
  %5178 = vmatprep.mubr.f32.mxu0 %v4859
  %5179 = vmatmul.mubr.f32.gmra.mxu0 %v4858
  %v5180 = vpop.f32.mrf.mxu0
  %v5181 = vadd.f32 0.0, %v5180
  %v5182 = vpop.f32.mrf.mxu0
  %5183 = vmatprep.mubr.f32.mxu0 %v4862
  %5184 = vmatmul.mubr.f32.gmra.mxu0 %v4861
  %v5185 = vpop.f32.mrf.mxu0
  %v5186 = vadd.f32 0.0, %v5185
  %v5187 = vpop.f32.mrf.mxu0
  %5188 = vmatprep.mubr.f32.mxu0 %v4865
  %5189 = vmatmul.mubr.f32.gmra.mxu0 %v4864
  %v5190 = vpop.f32.mrf.mxu0
  %v5191 = vadd.f32 0.0, %v5190
  %v5192 = vpop.f32.mrf.mxu0
  %5193 = vmatprep.mubr.f32.mxu0 %v4868
  %5194 = vmatmul.mubr.f32.gmra.mxu0 %v4867
  %v5195 = vpop.f32.mrf.mxu0
  %v5196 = vadd.f32 0.0, %v5195
  %v5197 = vpop.f32.mrf.mxu0
  %5198 = vmatprep.mubr.f32.mxu0 %v4871
  %5199 = vmatmul.mubr.f32.gmra.mxu0 %v4870
  %v5200 = vpop.f32.mrf.mxu0
  %v5201 = vadd.f32 0.0, %v5200
  %v5202 = vpop.f32.mrf.mxu0
  %5203 = vmatprep.mubr.f32.mxu0 %v4874
  %5204 = vmatmul.mubr.f32.gmra.mxu0 %v4873
  %v5205 = vpop.f32.mrf.mxu0
  %v5206 = vadd.f32 0.0, %v5205
  %v5207 = vpop.f32.mrf.mxu0
  %5208 = vmatprep.mubr.f32.mxu0 %v4877
  %5209 = vmatmul.mubr.f32.gmra.mxu0 %v4876
  %v5210 = vpop.f32.mrf.mxu0
  %v5211 = vadd.f32 0.0, %v5210
  %v5212 = vpop.f32.mrf.mxu0
  %5213 = vmatprep.mubr.f32.mxu0 %v4880
  %5214 = vmatmul.mubr.f32.gmra.mxu0 %v4879
  %v5215 = vpop.f32.mrf.mxu0
  %v5216 = vadd.f32 0.0, %v5215
  %v5217 = vpop.f32.mrf.mxu0
  %5218 = vmatprep.mubr.f32.mxu0 %v4883
  %5219 = vmatmul.mubr.f32.gmra.mxu0 %v4882
  %v5220 = vpop.f32.mrf.mxu0
  %v5221 = vadd.f32 0.0, %v5220
  %v5222 = vpop.f32.mrf.mxu0
  %5223 = vmatprep.mubr.f32.mxu0 %v4886
  %5224 = vmatmul.mubr.f32.gmra.mxu0 %v4885
  %v5225 = vpop.f32.mrf.mxu0
  %v5226 = vadd.f32 0.0, %v5225
  %v5227 = vpop.f32.mrf.mxu0
  %5228 = vmatprep.mubr.f32.mxu0 %v4889
  %5229 = vmatmul.mubr.f32.gmra.mxu0 %v4888
  %v5230 = vpop.f32.mrf.mxu0
  %v5231 = vadd.f32 0.0, %v5230
  %v5232 = vpop.f32.mrf.mxu0
  %5233 = vmatprep.mubr.f32.mxu0 %v4892
  %5234 = vmatmul.mubr.f32.gmra.mxu0 %v4891
  %v5235 = vpop.f32.mrf.mxu0
  %v5236 = vadd.f32 0.0, %v5235
  %v5237 = vpop.f32.mrf.mxu0
  %5238 = vmatprep.mubr.f32.mxu0 %v4895
  %5239 = vmatmul.mubr.f32.gmra.mxu0 %v4894
  %v5240 = vpop.f32.mrf.mxu0
  %v5241 = vadd.f32 0.0, %v5240
  %v5242 = vpop.f32.mrf.mxu0
  %5243 = vmatprep.mubr.f32.mxu0 %v4898
  %5244 = vmatmul.mubr.f32.gmra.mxu0 %v4897
  %v5245 = vpop.f32.mrf.mxu0
  %v5246 = vadd.f32 0.0, %v5245
  %v5247 = vpop.f32.mrf.mxu0
  %5248 = vmatprep.mubr.f32.mxu0 %v4901
  %5249 = vmatmul.mubr.f32.gmra.mxu0 %v4900
  %v5250 = vpop.f32.mrf.mxu0
  %v5251 = vadd.f32 0.0, %v5250
  %v5252 = vpop.f32.mrf.mxu0
  %5253 = vmatprep.mubr.f32.mxu0 %v4904
  %5254 = vmatmul.mubr.f32.gmra.mxu0 %v4903
  %v5255 = vpop.f32.mrf.mxu0
  %v5256 = vadd.f32 0.0, %v5255
  %v5257 = vpop.f32.mrf.mxu0
  %5258 = vdwg.mxu0
  %5259 = vmatprep.subr.mxu0 0.0
  %5260 = vmatpush1.msra.mxu0 0.0
  %5261 = vmatprep.subr.mxu0 0.0
  %5262 = vmatpush1.msra.mxu0 0.0
  %5263 = vmatprep.subr.mxu0 0.0
  %5264 = vmatpush1.msra.mxu0 0.0
  %5265 = vmatprep.subr.mxu0 0.0
  %5266 = vmatpush1.msra.mxu0 0.0
  %5267 = vmatprep.subr.mxu0 0.0
  %5268 = vmatpush1.msra.mxu0 0.0
  %5269 = vmatprep.subr.mxu0 0.0
  %5270 = vmatpush1.msra.mxu0 0.0
  %5271 = vmatprep.subr.mxu0 0.0
  %5272 = vmatpush1.msra.mxu0 0.0
  %5273 = vmatprep.subr.mxu0 0.0
  %5274 = vmatpush1.msra.mxu0 0.0
  %5275 = vmatprep.subr.mxu0 0.0
  %5276 = vmatpush1.msra.mxu0 0.0
  %5277 = vmatprep.subr.mxu0 0.0
  %5278 = vmatpush1.msra.mxu0 0.0
  %5279 = vmatprep.subr.mxu0 0.0
  %5280 = vmatpush1.msra.mxu0 0.0
  %5281 = vmatprep.subr.mxu0 0.0
  %5282 = vmatpush1.msra.mxu0 0.0
  %5283 = vmatprep.subr.mxu0 0.0
  %5284 = vmatpush1.msra.mxu0 %v477
  %5285 = vmatprep.subr.mxu0 0.0
  %5286 = vmatpush1.msra.mxu0 %v476
  %5287 = vmatprep.subr.mxu0 0.0
  %5288 = vmatpush1.msra.mxu0 %v475
  %5289 = vmatprep.subr.mxu0 0.0
  %5290 = vmatpush1.msra.mxu0 %v474
  %5291 = vmatprep.subr.mxu0 0.0
  %5292 = vmatpush2.msra.mxu0 0.0
  %5293 = vmatprep.subr.mxu0 0.0
  %5294 = vmatpush2.msra.mxu0 0.0
  %5295 = vmatprep.subr.mxu0 0.0
  %5296 = vmatpush2.msra.mxu0 0.0
  %5297 = vmatprep.subr.mxu0 0.0
  %5298 = vmatpush2.msra.mxu0 0.0
  %5299 = vmatprep.subr.mxu0 0.0
  %5300 = vmatpush2.msra.mxu0 0.0
  %5301 = vmatprep.subr.mxu0 0.0
  %5302 = vmatpush2.msra.mxu0 0.0
  %5303 = vmatprep.subr.mxu0 0.0
  %5304 = vmatpush2.msra.mxu0 0.0
  %5305 = vmatprep.subr.mxu0 0.0
  %5306 = vmatpush2.msra.mxu0 0.0
  %5307 = vmatprep.subr.mxu0 0.0
  %5308 = vmatpush2.msra.mxu0 0.0
  %5309 = vmatprep.subr.mxu0 0.0
  %5310 = vmatpush2.msra.mxu0 0.0
  %5311 = vmatprep.subr.mxu0 0.0
  %5312 = vmatpush2.msra.mxu0 0.0
  %5313 = vmatprep.subr.mxu0 0.0
  %5314 = vmatpush2.msra.mxu0 0.0
  %5315 = vmatprep.subr.mxu0 0.0
  %5316 = vmatpush2.msra.mxu0 0.0
  %5317 = vmatprep.subr.mxu0 0.0
  %5318 = vmatpush2.msra.mxu0 0.0
  %5319 = vmatprep.subr.mxu0 0.0
  %5320 = vmatpush2.msra.mxu0 0.0
  %5321 = vmatprep.subr.mxu0 0.0
  %5322 = vmatpush2.msra.mxu0 0.0
  %5323 = vmatprep.mubr.f32.mxu0 0.0
  %5324 = vmatmul.mubr.f32.gmra.mxu0 %v4907
  %v5325 = vpop.f32.mrf.mxu0
  %v5326 = vadd.f32 %v5081, %v5325
  %v5327 = vpop.f32.mrf.mxu0
  %5328 = vmatprep.mubr.f32.mxu0 0.0
  %5329 = vmatmul.mubr.f32.gmra.mxu0 %v4910
  %v5330 = vpop.f32.mrf.mxu0
  %v5331 = vadd.f32 %v5086, %v5330
  %v5332 = vpop.f32.mrf.mxu0
  %5333 = vmatprep.mubr.f32.mxu0 0.0
  %5334 = vmatmul.mubr.f32.gmra.mxu0 %v4913
  %v5335 = vpop.f32.mrf.mxu0
  %v5336 = vadd.f32 %v5091, %v5335
  %v5337 = vpop.f32.mrf.mxu0
  %5338 = vmatprep.mubr.f32.mxu0 0.0
  %5339 = vmatmul.mubr.f32.gmra.mxu0 %v4916
  %v5340 = vpop.f32.mrf.mxu0
  %v5341 = vadd.f32 %v5096, %v5340
  %v5342 = vpop.f32.mrf.mxu0
  %5343 = vmatprep.mubr.f32.mxu0 0.0
  %5344 = vmatmul.mubr.f32.gmra.mxu0 %v4919
  %v5345 = vpop.f32.mrf.mxu0
  %v5346 = vadd.f32 %v5101, %v5345
  %v5347 = vpop.f32.mrf.mxu0
  %5348 = vmatprep.mubr.f32.mxu0 0.0
  %5349 = vmatmul.mubr.f32.gmra.mxu0 %v4922
  %v5350 = vpop.f32.mrf.mxu0
  %v5351 = vadd.f32 %v5106, %v5350
  %v5352 = vpop.f32.mrf.mxu0
  %5353 = vmatprep.mubr.f32.mxu0 0.0
  %5354 = vmatmul.mubr.f32.gmra.mxu0 %v4925
  %v5355 = vpop.f32.mrf.mxu0
  %v5356 = vadd.f32 %v5111, %v5355
  %v5357 = vpop.f32.mrf.mxu0
  %5358 = vmatprep.mubr.f32.mxu0 0.0
  %5359 = vmatmul.mubr.f32.gmra.mxu0 %v4928
  %v5360 = vpop.f32.mrf.mxu0
  %v5361 = vadd.f32 %v5116, %v5360
  %v5362 = vpop.f32.mrf.mxu0
  %5363 = vmatprep.mubr.f32.mxu0 0.0
  %5364 = vmatmul.mubr.f32.gmra.mxu0 %v4931
  %v5365 = vpop.f32.mrf.mxu0
  %v5366 = vadd.f32 %v5121, %v5365
  %v5367 = vpop.f32.mrf.mxu0
  %5368 = vmatprep.mubr.f32.mxu0 0.0
  %5369 = vmatmul.mubr.f32.gmra.mxu0 %v4934
  %v5370 = vpop.f32.mrf.mxu0
  %v5371 = vadd.f32 %v5126, %v5370
  %v5372 = vpop.f32.mrf.mxu0
  %5373 = vmatprep.mubr.f32.mxu0 0.0
  %5374 = vmatmul.mubr.f32.gmra.mxu0 %v4937
  %v5375 = vpop.f32.mrf.mxu0
  %v5376 = vadd.f32 %v5131, %v5375
  %v5377 = vpop.f32.mrf.mxu0
  %5378 = vmatprep.mubr.f32.mxu0 0.0
  %5379 = vmatmul.mubr.f32.gmra.mxu0 %v4940
  %v5380 = vpop.f32.mrf.mxu0
  %v5381 = vadd.f32 %v5136, %v5380
  %v5382 = vpop.f32.mrf.mxu0
  %5383 = vmatprep.mubr.f32.mxu0 0.0
  %5384 = vmatmul.mubr.f32.gmra.mxu0 %v4943
  %v5385 = vpop.f32.mrf.mxu0
  %v5386 = vadd.f32 %v5141, %v5385
  %v5387 = vpop.f32.mrf.mxu0
  %5388 = vmatprep.mubr.f32.mxu0 0.0
  %5389 = vmatmul.mubr.f32.gmra.mxu0 %v4946
  %v5390 = vpop.f32.mrf.mxu0
  %v5391 = vadd.f32 %v5146, %v5390
  %v5392 = vpop.f32.mrf.mxu0
  %5393 = vmatprep.mubr.f32.mxu0 0.0
  %5394 = vmatmul.mubr.f32.gmra.mxu0 %v4949
  %v5395 = vpop.f32.mrf.mxu0
  %v5396 = vadd.f32 %v5151, %v5395
  %v5397 = vpop.f32.mrf.mxu0
  %5398 = vmatprep.mubr.f32.mxu0 0.0
  %5399 = vmatmul.mubr.f32.gmra.mxu0 %v4952
  %v5400 = vpop.f32.mrf.mxu0
  %v5401 = vadd.f32 %v5156, %v5400
  %v5402 = vpop.f32.mrf.mxu0
  %5403 = vmatprep.mubr.f32.mxu0 0.0
  %5404 = vmatmul.mubr.f32.gmra.mxu0 %v4955
  %v5405 = vpop.f32.mrf.mxu0
  %v5406 = vadd.f32 %v5161, %v5405
  %v5407 = vpop.f32.mrf.mxu0
  %5408 = vmatprep.mubr.f32.mxu0 0.0
  %5409 = vmatmul.mubr.f32.gmra.mxu0 %v4958
  %v5410 = vpop.f32.mrf.mxu0
  %v5411 = vadd.f32 %v5166, %v5410
  %v5412 = vpop.f32.mrf.mxu0
  %5413 = vmatprep.mubr.f32.mxu0 0.0
  %5414 = vmatmul.mubr.f32.gmra.mxu0 %v4961
  %v5415 = vpop.f32.mrf.mxu0
  %v5416 = vadd.f32 %v5171, %v5415
  %v5417 = vpop.f32.mrf.mxu0
  %5418 = vmatprep.mubr.f32.mxu0 0.0
  %5419 = vmatmul.mubr.f32.gmra.mxu0 %v4964
  %v5420 = vpop.f32.mrf.mxu0
  %v5421 = vadd.f32 %v5176, %v5420
  %v5422 = vpop.f32.mrf.mxu0
  %5423 = vmatprep.mubr.f32.mxu0 0.0
  %5424 = vmatmul.mubr.f32.gmra.mxu0 %v4967
  %v5425 = vpop.f32.mrf.mxu0
  %v5426 = vadd.f32 %v5181, %v5425
  %v5427 = vpop.f32.mrf.mxu0
  %5428 = vmatprep.mubr.f32.mxu0 0.0
  %5429 = vmatmul.mubr.f32.gmra.mxu0 %v4970
  %v5430 = vpop.f32.mrf.mxu0
  %v5431 = vadd.f32 %v5186, %v5430
  %v5432 = vpop.f32.mrf.mxu0
  %5433 = vmatprep.mubr.f32.mxu0 0.0
  %5434 = vmatmul.mubr.f32.gmra.mxu0 %v4973
  %v5435 = vpop.f32.mrf.mxu0
  %v5436 = vadd.f32 %v5191, %v5435
  %v5437 = vpop.f32.mrf.mxu0
  %5438 = vmatprep.mubr.f32.mxu0 0.0
  %5439 = vmatmul.mubr.f32.gmra.mxu0 %v4976
  %v5440 = vpop.f32.mrf.mxu0
  %v5441 = vadd.f32 %v5196, %v5440
  %v5442 = vpop.f32.mrf.mxu0
  %5443 = vmatprep.mubr.f32.mxu0 0.0
  %5444 = vmatmul.mubr.f32.gmra.mxu0 %v4979
  %v5445 = vpop.f32.mrf.mxu0
  %v5446 = vadd.f32 %v5201, %v5445
  %v5447 = vpop.f32.mrf.mxu0
  %5448 = vmatprep.mubr.f32.mxu0 0.0
  %5449 = vmatmul.mubr.f32.gmra.mxu0 %v4982
  %v5450 = vpop.f32.mrf.mxu0
  %v5451 = vadd.f32 %v5206, %v5450
  %v5452 = vpop.f32.mrf.mxu0
  %5453 = vmatprep.mubr.f32.mxu0 0.0
  %5454 = vmatmul.mubr.f32.gmra.mxu0 %v4985
  %v5455 = vpop.f32.mrf.mxu0
  %v5456 = vadd.f32 %v5211, %v5455
  %v5457 = vpop.f32.mrf.mxu0
  %5458 = vmatprep.mubr.f32.mxu0 0.0
  %5459 = vmatmul.mubr.f32.gmra.mxu0 %v4988
  %v5460 = vpop.f32.mrf.mxu0
  %v5461 = vadd.f32 %v5216, %v5460
  %v5462 = vpop.f32.mrf.mxu0
  %5463 = vmatprep.mubr.f32.mxu0 0.0
  %5464 = vmatmul.mubr.f32.gmra.mxu0 %v4991
  %v5465 = vpop.f32.mrf.mxu0
  %v5466 = vadd.f32 %v5221, %v5465
  %v5467 = vpop.f32.mrf.mxu0
  %5468 = vmatprep.mubr.f32.mxu0 0.0
  %5469 = vmatmul.mubr.f32.gmra.mxu0 %v4994
  %v5470 = vpop.f32.mrf.mxu0
  %v5471 = vadd.f32 %v5226, %v5470
  %v5472 = vpop.f32.mrf.mxu0
  %5473 = vmatprep.mubr.f32.mxu0 0.0
  %5474 = vmatmul.mubr.f32.gmra.mxu0 %v4997
  %v5475 = vpop.f32.mrf.mxu0
  %v5476 = vadd.f32 %v5231, %v5475
  %v5477 = vpop.f32.mrf.mxu0
  %5478 = vmatprep.mubr.f32.mxu0 0.0
  %5479 = vmatmul.mubr.f32.gmra.mxu0 %v5000
  %v5480 = vpop.f32.mrf.mxu0
  %v5481 = vadd.f32 %v5236, %v5480
  %v5482 = vpop.f32.mrf.mxu0
  %5483 = vmatprep.mubr.f32.mxu0 0.0
  %5484 = vmatmul.mubr.f32.gmra.mxu0 %v5003
  %v5485 = vpop.f32.mrf.mxu0
  %v5486 = vadd.f32 %v5241, %v5485
  %v5487 = vpop.f32.mrf.mxu0
  %5488 = vmatprep.mubr.f32.mxu0 0.0
  %5489 = vmatmul.mubr.f32.gmra.mxu0 %v5006
  %v5490 = vpop.f32.mrf.mxu0
  %v5491 = vadd.f32 %v5246, %v5490
  %v5492 = vpop.f32.mrf.mxu0
  %5493 = vmatprep.mubr.f32.mxu0 0.0
  %5494 = vmatmul.mubr.f32.gmra.mxu0 %v5009
  %v5495 = vpop.f32.mrf.mxu0
  %v5496 = vadd.f32 %v5251, %v5495
  %v5497 = vpop.f32.mrf.mxu0
  %5498 = vmatprep.mubr.f32.mxu0 0.0
  %5499 = vmatmul.mubr.f32.gmra.mxu0 %v5012
  %v5500 = vpop.f32.mrf.mxu0
  %v5501 = vadd.f32 %v5256, %v5500
  %v5502 = vpop.f32.mrf.mxu0
  %5503 = vdwg.mxu0
  %s5504 = scalar_lea.vmem %s4, 32
  %v5505 = vld [vmem:[%s5504] sm:$0xff]
  %v5507 = vsel %vm1894, %v5326, 0
  %v5510 = vsel %vm1894, %v5331, 0
  %v5513 = vsel %vm1894, %v5336, 0
  %v5516 = vsel %vm1894, %v5341, 0
  %v5519 = vsel %vm1894, %v5346, 0
  %v5522 = vsel %vm1894, %v5351, 0
  %v5525 = vsel %vm1894, %v5356, 0
  %v5528 = vsel %vm1894, %v5361, 0
  %v5531 = vsel %vm1894, %v5366, 0
  %v5534 = vsel %vm1894, %v5371, 0
  %v5537 = vsel %vm1894, %v5376, 0
  %v5540 = vsel %vm1894, %v5381, 0
  %v5543 = vsel %vm1894, %v5386, 0
  %v5546 = vsel %vm1894, %v5391, 0
  %v5549 = vsel %vm1894, %v5396, 0
  %v5552 = vsel %vm1894, %v5401, 0
  %v5555 = vsel %vm1894, %v5406, 0
  %v5558 = vsel %vm1894, %v5411, 0
  %v5561 = vsel %vm1894, %v5416, 0
  %v5564 = vsel %vm1894, %v5421, 0
  %v5567 = vsel %vm1894, %v5426, 0
  %v5570 = vsel %vm1894, %v5431, 0
  %v5573 = vsel %vm1894, %v5436, 0
  %v5576 = vsel %vm1894, %v5441, 0
  %v5579 = vsel %vm1894, %v5446, 0
  %v5582 = vsel %vm1894, %v5451, 0
  %v5585 = vsel %vm1894, %v5456, 0
  %v5588 = vsel %vm1894, %v5461, 0
  %v5591 = vsel %vm1894, %v5466, 0
  %v5594 = vsel %vm1894, %v5471, 0
  %v5597 = vsel %vm1894, %v5476, 0
  %v5600 = vsel %vm1894, %v5481, 0
  %v5603 = vsel %vm1894, %v5486, 0
  %v5606 = vsel %vm1894, %v5491, 0
  %v5609 = vsel %vm1894, %v5496, 0
  %v5612 = vsel %vm1894, %v5501, 0
  %5614 = vmatprep.subr.mxu0 0.0
  %5615 = vmatpush1.msra.mxu0 0.0
  %5616 = vmatprep.subr.mxu0 0.0
  %5617 = vmatpush1.msra.mxu0 0.0
  %5618 = vmatprep.subr.mxu0 0.0
  %5619 = vmatpush1.msra.mxu0 0.0
  %5620 = vmatprep.subr.mxu0 0.0
  %5621 = vmatpush1.msra.mxu0 0.0
  %5622 = vmatprep.subr.mxu0 0.0
  %5623 = vmatpush1.msra.mxu0 0.0
  %5624 = vmatprep.subr.mxu0 0.0
  %5625 = vmatpush1.msra.mxu0 0.0
  %5626 = vmatprep.subr.mxu0 0.0
  %5627 = vmatpush1.msra.mxu0 0.0
  %5628 = vmatprep.subr.mxu0 0.0
  %5629 = vmatpush1.msra.mxu0 0.0
  %5630 = vmatprep.subr.mxu0 0.0
  %5631 = vmatpush1.msra.mxu0 0.0
  %5632 = vmatprep.subr.mxu0 0.0
  %5633 = vmatpush1.msra.mxu0 0.0
  %5634 = vmatprep.subr.mxu0 0.0
  %5635 = vmatpush1.msra.mxu0 0.0
  %5636 = vmatprep.subr.mxu0 0.0
  %5637 = vmatpush1.msra.mxu0 0.0
  %5638 = vmatprep.subr.mxu0 0.0
  %5639 = vmatpush1.msra.mxu0 0.0
  %5640 = vmatprep.subr.mxu0 0.0
  %5641 = vmatpush1.msra.mxu0 0.0
  %5642 = vmatprep.subr.mxu0 0.0
  %5643 = vmatpush1.msra.mxu0 0.0
  %5644 = vmatprep.subr.mxu0 0.0
  %5645 = vmatpush1.msra.mxu0 %v5505
  %5646 = vmatprep.subr.mxu0 0.0
  %5647 = vmatpush2.msra.mxu0 0.0
  %5648 = vmatprep.subr.mxu0 0.0
  %5649 = vmatpush2.msra.mxu0 0.0
  %5650 = vmatprep.subr.mxu0 0.0
  %5651 = vmatpush2.msra.mxu0 0.0
  %5652 = vmatprep.subr.mxu0 0.0
  %5653 = vmatpush2.msra.mxu0 0.0
  %5654 = vmatprep.subr.mxu0 0.0
  %5655 = vmatpush2.msra.mxu0 0.0
  %5656 = vmatprep.subr.mxu0 0.0
  %5657 = vmatpush2.msra.mxu0 0.0
  %5658 = vmatprep.subr.mxu0 0.0
  %5659 = vmatpush2.msra.mxu0 0.0
  %5660 = vmatprep.subr.mxu0 0.0
  %5661 = vmatpush2.msra.mxu0 0.0
  %5662 = vmatprep.subr.mxu0 0.0
  %5663 = vmatpush2.msra.mxu0 0.0
  %5664 = vmatprep.subr.mxu0 0.0
  %5665 = vmatpush2.msra.mxu0 0.0
  %5666 = vmatprep.subr.mxu0 0.0
  %5667 = vmatpush2.msra.mxu0 0.0
  %5668 = vmatprep.subr.mxu0 0.0
  %5669 = vmatpush2.msra.mxu0 0.0
  %5670 = vmatprep.subr.mxu0 0.0
  %5671 = vmatpush2.msra.mxu0 0.0
  %5672 = vmatprep.subr.mxu0 0.0
  %5673 = vmatpush2.msra.mxu0 0.0
  %5674 = vmatprep.subr.mxu0 0.0
  %5675 = vmatpush2.msra.mxu0 0.0
  %5676 = vmatprep.subr.mxu0 0.0
  %5677 = vmatpush2.msra.mxu0 0.0
  %5678 = vmatprep.mubr.f32.mxu0 0.0
  %5679 = vmatmul.mubr.f32.gmra.mxu0 %v5507
  %v5680 = vpop.f32.mrf.mxu0
  %v5681 = vadd.f32 0.0, %v5680
  %v5682 = vpop.f32.mrf.mxu0
  %5683 = vmatprep.mubr.f32.mxu0 0.0
  %5684 = vmatmul.mubr.f32.gmra.mxu0 %v5510
  %v5685 = vpop.f32.mrf.mxu0
  %v5686 = vadd.f32 0.0, %v5685
  %v5687 = vpop.f32.mrf.mxu0
  %5688 = vmatprep.mubr.f32.mxu0 0.0
  %5689 = vmatmul.mubr.f32.gmra.mxu0 %v5513
  %v5690 = vpop.f32.mrf.mxu0
  %v5691 = vadd.f32 0.0, %v5690
  %v5692 = vpop.f32.mrf.mxu0
  %5693 = vmatprep.mubr.f32.mxu0 0.0
  %5694 = vmatmul.mubr.f32.gmra.mxu0 %v5516
  %v5695 = vpop.f32.mrf.mxu0
  %v5696 = vadd.f32 0.0, %v5695
  %v5697 = vpop.f32.mrf.mxu0
  %5698 = vmatprep.mubr.f32.mxu0 0.0
  %5699 = vmatmul.mubr.f32.gmra.mxu0 %v5519
  %v5700 = vpop.f32.mrf.mxu0
  %v5701 = vadd.f32 0.0, %v5700
  %v5702 = vpop.f32.mrf.mxu0
  %5703 = vmatprep.mubr.f32.mxu0 0.0
  %5704 = vmatmul.mubr.f32.gmra.mxu0 %v5522
  %v5705 = vpop.f32.mrf.mxu0
  %v5706 = vadd.f32 0.0, %v5705
  %v5707 = vpop.f32.mrf.mxu0
  %5708 = vmatprep.mubr.f32.mxu0 0.0
  %5709 = vmatmul.mubr.f32.gmra.mxu0 %v5525
  %v5710 = vpop.f32.mrf.mxu0
  %v5711 = vadd.f32 0.0, %v5710
  %v5712 = vpop.f32.mrf.mxu0
  %5713 = vmatprep.mubr.f32.mxu0 0.0
  %5714 = vmatmul.mubr.f32.gmra.mxu0 %v5528
  %v5715 = vpop.f32.mrf.mxu0
  %v5716 = vadd.f32 0.0, %v5715
  %v5717 = vpop.f32.mrf.mxu0
  %5718 = vmatprep.mubr.f32.mxu0 0.0
  %5719 = vmatmul.mubr.f32.gmra.mxu0 %v5531
  %v5720 = vpop.f32.mrf.mxu0
  %v5721 = vadd.f32 0.0, %v5720
  %v5722 = vpop.f32.mrf.mxu0
  %5723 = vmatprep.mubr.f32.mxu0 0.0
  %5724 = vmatmul.mubr.f32.gmra.mxu0 %v5534
  %v5725 = vpop.f32.mrf.mxu0
  %v5726 = vadd.f32 0.0, %v5725
  %v5727 = vpop.f32.mrf.mxu0
  %5728 = vmatprep.mubr.f32.mxu0 0.0
  %5729 = vmatmul.mubr.f32.gmra.mxu0 %v5537
  %v5730 = vpop.f32.mrf.mxu0
  %v5731 = vadd.f32 0.0, %v5730
  %v5732 = vpop.f32.mrf.mxu0
  %5733 = vmatprep.mubr.f32.mxu0 0.0
  %5734 = vmatmul.mubr.f32.gmra.mxu0 %v5540
  %v5735 = vpop.f32.mrf.mxu0
  %v5736 = vadd.f32 0.0, %v5735
  %v5737 = vpop.f32.mrf.mxu0
  %5738 = vmatprep.mubr.f32.mxu0 0.0
  %5739 = vmatmul.mubr.f32.gmra.mxu0 %v5543
  %v5740 = vpop.f32.mrf.mxu0
  %v5741 = vadd.f32 0.0, %v5740
  %v5742 = vpop.f32.mrf.mxu0
  %5743 = vmatprep.mubr.f32.mxu0 0.0
  %5744 = vmatmul.mubr.f32.gmra.mxu0 %v5546
  %v5745 = vpop.f32.mrf.mxu0
  %v5746 = vadd.f32 0.0, %v5745
  %v5747 = vpop.f32.mrf.mxu0
  %5748 = vmatprep.mubr.f32.mxu0 0.0
  %5749 = vmatmul.mubr.f32.gmra.mxu0 %v5549
  %v5750 = vpop.f32.mrf.mxu0
  %v5751 = vadd.f32 0.0, %v5750
  %v5752 = vpop.f32.mrf.mxu0
  %5753 = vmatprep.mubr.f32.mxu0 0.0
  %5754 = vmatmul.mubr.f32.gmra.mxu0 %v5552
  %v5755 = vpop.f32.mrf.mxu0
  %v5756 = vadd.f32 0.0, %v5755
  %v5757 = vpop.f32.mrf.mxu0
  %5758 = vmatprep.mubr.f32.mxu0 0.0
  %5759 = vmatmul.mubr.f32.gmra.mxu0 %v5555
  %v5760 = vpop.f32.mrf.mxu0
  %v5761 = vadd.f32 0.0, %v5760
  %v5762 = vpop.f32.mrf.mxu0
  %5763 = vmatprep.mubr.f32.mxu0 0.0
  %5764 = vmatmul.mubr.f32.gmra.mxu0 %v5558
  %v5765 = vpop.f32.mrf.mxu0
  %v5766 = vadd.f32 0.0, %v5765
  %v5767 = vpop.f32.mrf.mxu0
  %5768 = vmatprep.mubr.f32.mxu0 0.0
  %5769 = vmatmul.mubr.f32.gmra.mxu0 %v5561
  %v5770 = vpop.f32.mrf.mxu0
  %v5771 = vadd.f32 0.0, %v5770
  %v5772 = vpop.f32.mrf.mxu0
  %5773 = vmatprep.mubr.f32.mxu0 0.0
  %5774 = vmatmul.mubr.f32.gmra.mxu0 %v5564
  %v5775 = vpop.f32.mrf.mxu0
  %v5776 = vadd.f32 0.0, %v5775
  %v5777 = vpop.f32.mrf.mxu0
  %5778 = vmatprep.mubr.f32.mxu0 0.0
  %5779 = vmatmul.mubr.f32.gmra.mxu0 %v5567
  %v5780 = vpop.f32.mrf.mxu0
  %v5781 = vadd.f32 0.0, %v5780
  %v5782 = vpop.f32.mrf.mxu0
  %5783 = vmatprep.mubr.f32.mxu0 0.0
  %5784 = vmatmul.mubr.f32.gmra.mxu0 %v5570
  %v5785 = vpop.f32.mrf.mxu0
  %v5786 = vadd.f32 0.0, %v5785
  %v5787 = vpop.f32.mrf.mxu0
  %5788 = vmatprep.mubr.f32.mxu0 0.0
  %5789 = vmatmul.mubr.f32.gmra.mxu0 %v5573
  %v5790 = vpop.f32.mrf.mxu0
  %v5791 = vadd.f32 0.0, %v5790
  %v5792 = vpop.f32.mrf.mxu0
  %5793 = vmatprep.mubr.f32.mxu0 0.0
  %5794 = vmatmul.mubr.f32.gmra.mxu0 %v5576
  %v5795 = vpop.f32.mrf.mxu0
  %v5796 = vadd.f32 0.0, %v5795
  %v5797 = vpop.f32.mrf.mxu0
  %5798 = vmatprep.mubr.f32.mxu0 0.0
  %5799 = vmatmul.mubr.f32.gmra.mxu0 %v5579
  %v5800 = vpop.f32.mrf.mxu0
  %v5801 = vadd.f32 0.0, %v5800
  %v5802 = vpop.f32.mrf.mxu0
  %5803 = vmatprep.mubr.f32.mxu0 0.0
  %5804 = vmatmul.mubr.f32.gmra.mxu0 %v5582
  %v5805 = vpop.f32.mrf.mxu0
  %v5806 = vadd.f32 0.0, %v5805
  %v5807 = vpop.f32.mrf.mxu0
  %5808 = vmatprep.mubr.f32.mxu0 0.0
  %5809 = vmatmul.mubr.f32.gmra.mxu0 %v5585
  %v5810 = vpop.f32.mrf.mxu0
  %v5811 = vadd.f32 0.0, %v5810
  %v5812 = vpop.f32.mrf.mxu0
  %5813 = vmatprep.mubr.f32.mxu0 0.0
  %5814 = vmatmul.mubr.f32.gmra.mxu0 %v5588
  %v5815 = vpop.f32.mrf.mxu0
  %v5816 = vadd.f32 0.0, %v5815
  %v5817 = vpop.f32.mrf.mxu0
  %5818 = vmatprep.mubr.f32.mxu0 0.0
  %5819 = vmatmul.mubr.f32.gmra.mxu0 %v5591
  %v5820 = vpop.f32.mrf.mxu0
  %v5821 = vadd.f32 0.0, %v5820
  %v5822 = vpop.f32.mrf.mxu0
  %5823 = vmatprep.mubr.f32.mxu0 0.0
  %5824 = vmatmul.mubr.f32.gmra.mxu0 %v5594
  %v5825 = vpop.f32.mrf.mxu0
  %v5826 = vadd.f32 0.0, %v5825
  %v5827 = vpop.f32.mrf.mxu0
  %5828 = vmatprep.mubr.f32.mxu0 0.0
  %5829 = vmatmul.mubr.f32.gmra.mxu0 %v5597
  %v5830 = vpop.f32.mrf.mxu0
  %v5831 = vadd.f32 0.0, %v5830
  %v5832 = vpop.f32.mrf.mxu0
  %5833 = vmatprep.mubr.f32.mxu0 0.0
  %5834 = vmatmul.mubr.f32.gmra.mxu0 %v5600
  %v5835 = vpop.f32.mrf.mxu0
  %v5836 = vadd.f32 0.0, %v5835
  %v5837 = vpop.f32.mrf.mxu0
  %5838 = vmatprep.mubr.f32.mxu0 0.0
  %5839 = vmatmul.mubr.f32.gmra.mxu0 %v5603
  %v5840 = vpop.f32.mrf.mxu0
  %v5841 = vadd.f32 0.0, %v5840
  %v5842 = vpop.f32.mrf.mxu0
  %5843 = vmatprep.mubr.f32.mxu0 0.0
  %5844 = vmatmul.mubr.f32.gmra.mxu0 %v5606
  %v5845 = vpop.f32.mrf.mxu0
  %v5846 = vadd.f32 0.0, %v5845
  %v5847 = vpop.f32.mrf.mxu0
  %5848 = vmatprep.mubr.f32.mxu0 0.0
  %5849 = vmatmul.mubr.f32.gmra.mxu0 %v5609
  %v5850 = vpop.f32.mrf.mxu0
  %v5851 = vadd.f32 0.0, %v5850
  %v5852 = vpop.f32.mrf.mxu0
  %5853 = vmatprep.mubr.f32.mxu0 0.0
  %5854 = vmatmul.mubr.f32.gmra.mxu0 %v5612
  %v5855 = vpop.f32.mrf.mxu0
  %v5856 = vadd.f32 0.0, %v5855
  %v5857 = vpop.f32.mrf.mxu0
  %5858 = vdwg.mxu0
  %v5859 = vadd.f32 %v4761, %v5681
  %v5860 = vadd.f32 %v4762, %v5686
  %v5861 = vadd.f32 %v4763, %v5691
  %v5862 = vadd.f32 %v4764, %v5696
  %v5863 = vadd.f32 %v4765, %v5701
  %v5864 = vadd.f32 %v4766, %v5706
  %v5865 = vadd.f32 %v4767, %v5711
  %v5866 = vadd.f32 %v4768, %v5716
  %v5867 = vadd.f32 %v4769, %v5721
  %v5868 = vadd.f32 %v4770, %v5726
  %v5869 = vadd.f32 %v4771, %v5731
  %v5870 = vadd.f32 %v4772, %v5736
  %v5871 = vadd.f32 %v4773, %v5741
  %v5872 = vadd.f32 %v4774, %v5746
  %v5873 = vadd.f32 %v4775, %v5751
  %v5874 = vadd.f32 %v4776, %v5756
  %v5875 = vadd.f32 %v4777, %v5761
  %v5876 = vadd.f32 %v4778, %v5766
  %v5877 = vadd.f32 %v4779, %v5771
  %v5878 = vadd.f32 %v4780, %v5776
  %v5879 = vadd.f32 %v4781, %v5781
  %v5880 = vadd.f32 %v4782, %v5786
  %v5881 = vadd.f32 %v4783, %v5791
  %v5882 = vadd.f32 %v4784, %v5796
  %v5883 = vadd.f32 %v4785, %v5801
  %v5884 = vadd.f32 %v4786, %v5806
  %v5885 = vadd.f32 %v4787, %v5811
  %v5886 = vadd.f32 %v4788, %v5816
  %v5887 = vadd.f32 %v4789, %v5821
  %v5888 = vadd.f32 %v4790, %v5826
  %v5889 = vadd.f32 %v4791, %v5831
  %v5890 = vadd.f32 %v4792, %v5836
  %v5891 = vadd.f32 %v4793, %v5841
  %v5892 = vadd.f32 %v4794, %v5846
  %v5893 = vadd.f32 %v4795, %v5851
  %v5894 = vadd.f32 %v4796, %v5856
  %s5895 = scalar_lea.vmem %s3, 4320
  %v5896 = vld [vmem:[%s5895] sm:$0xff]
  %v5897 = vld [vmem:[%s5895 + $0x8] sm:$0xff]
  %v5898 = vld [vmem:[%s5895 + $0x10] sm:$0xff]
  %v5899 = vld [vmem:[%s5895 + $0x18] sm:$0xff]
  %v5900 = vld [vmem:[%s5895 + $0x20] sm:$0xff]
  %v5901 = vld [vmem:[%s5895 + $0x28] sm:$0xff]
  %v5902 = vld [vmem:[%s5895 + $0x30] sm:$0xff]
  %v5903 = vld [vmem:[%s5895 + $0x38] sm:$0xff]
  %v5904 = vld [vmem:[%s5895 + $0x40] sm:$0xff]
  %v5905 = vld [vmem:[%s5895 + $0x48] sm:$0xff]
  %v5906 = vld [vmem:[%s5895 + $0x50] sm:$0xff]
  %v5907 = vld [vmem:[%s5895 + $0x58] sm:$0xff]
  %v5908 = vld [vmem:[%s5895 + $0x60] sm:$0xff]
  %v5909 = vld [vmem:[%s5895 + $0x68] sm:$0xff]
  %v5910 = vld [vmem:[%s5895 + $0x70] sm:$0xff]
  %v5911 = vld [vmem:[%s5895 + $0x78] sm:$0xff]
  %v5912 = vld [vmem:[%s5895 + $0x80] sm:$0xff]
  %v5913 = vld [vmem:[%s5895 + $0x88] sm:$0xff]
  %v5914 = vld [vmem:[%s5895 + $0x90] sm:$0xff]
  %v5915 = vld [vmem:[%s5895 + $0x98] sm:$0xff]
  %v5916 = vld [vmem:[%s5895 + $0xa0] sm:$0xff]
  %v5917 = vld [vmem:[%s5895 + $0xa8] sm:$0xff]
  %v5918 = vld [vmem:[%s5895 + $0xb0] sm:$0xff]
  %v5919 = vld [vmem:[%s5895 + $0xb8] sm:$0xff]
  %v5920 = vld [vmem:[%s5895 + $0xc0] sm:$0xff]
  %v5921 = vld [vmem:[%s5895 + $0xc8] sm:$0xff]
  %v5922 = vld [vmem:[%s5895 + $0xd0] sm:$0xff]
  %v5923 = vld [vmem:[%s5895 + $0xd8] sm:$0xff]
  %v5924 = vld [vmem:[%s5895 + $0xe0] sm:$0xff]
  %v5925 = vld [vmem:[%s5895 + $0xe8] sm:$0xff]
  %v5926 = vld [vmem:[%s5895 + $0xf0] sm:$0xff]
  %v5927 = vld [vmem:[%s5895 + $0xf8] sm:$0xff]
  %v5928 = vld [vmem:[%s5895 + $0x100] sm:$0xff]
  %v5929 = vld [vmem:[%s5895 + $0x108] sm:$0xff]
  %v5930 = vld [vmem:[%s5895 + $0x110] sm:$0xff]
  %v5931 = vld [vmem:[%s5895 + $0x118] sm:$0xff]
  %v5932 = vld [vmem:[%s5895 + $0x120] sm:$0xff]
  %v5933 = vld [vmem:[%s5895 + $0x128] sm:$0xff]
  %v5934 = vld [vmem:[%s5895 + $0x130] sm:$0xff]
  %v5935 = vld [vmem:[%s5895 + $0x138] sm:$0xff]
  %v5936 = vld [vmem:[%s5895 + $0x140] sm:$0xff]
  %v5937 = vld [vmem:[%s5895 + $0x148] sm:$0xff]
  %v5938 = vld [vmem:[%s5895 + $0x150] sm:$0xff]
  %v5939 = vld [vmem:[%s5895 + $0x158] sm:$0xff]
  %v5940 = vld [vmem:[%s5895 + $0x160] sm:$0xff]
  %v5941 = vld [vmem:[%s5895 + $0x168] sm:$0xff]
  %v5942 = vld [vmem:[%s5895 + $0x170] sm:$0xff]
  %v5943 = vld [vmem:[%s5895 + $0x178] sm:$0xff]
  %v5944 = vld [vmem:[%s5895 + $0x180] sm:$0xff]
  %v5945 = vld [vmem:[%s5895 + $0x188] sm:$0xff]
  %v5946 = vld [vmem:[%s5895 + $0x190] sm:$0xff]
  %v5947 = vld [vmem:[%s5895 + $0x198] sm:$0xff]
  %v5948 = vld [vmem:[%s5895 + $0x1a0] sm:$0xff]
  %v5949 = vld [vmem:[%s5895 + $0x1a8] sm:$0xff]
  %v5950 = vld [vmem:[%s5895 + $0x1b0] sm:$0xff]
  %v5951 = vld [vmem:[%s5895 + $0x1b8] sm:$0xff]
  %v5952 = vld [vmem:[%s5895 + $0x1c0] sm:$0xff]
  %v5953 = vld [vmem:[%s5895 + $0x1c8] sm:$0xff]
  %v5954 = vld [vmem:[%s5895 + $0x1d0] sm:$0xff]
  %v5955 = vld [vmem:[%s5895 + $0x1d8] sm:$0xff]
  %v5956 = vld [vmem:[%s5895 + $0x1e0] sm:$0xff]
  %v5957 = vld [vmem:[%s5895 + $0x1e8] sm:$0xff]
  %v5958 = vld [vmem:[%s5895 + $0x1f0] sm:$0xff]
  %v5959 = vld [vmem:[%s5895 + $0x1f8] sm:$0xff]
  %v5960 = vld [vmem:[%s5895 + $0x200] sm:$0xff]
  %v5961 = vld [vmem:[%s5895 + $0x208] sm:$0xff]
  %v5962 = vld [vmem:[%s5895 + $0x210] sm:$0xff]
  %v5963 = vld [vmem:[%s5895 + $0x218] sm:$0xff]
  %v5964 = vld [vmem:[%s5895 + $0x220] sm:$0xff]
  %v5965 = vld [vmem:[%s5895 + $0x228] sm:$0xff]
  %v5966 = vld [vmem:[%s5895 + $0x230] sm:$0xff]
  %v5967 = vld [vmem:[%s5895 + $0x238] sm:$0xff]
  %v5968 = vld [vmem:[%s5895 + $0x240] sm:$0xff]
  %v5969 = vld [vmem:[%s5895 + $0x248] sm:$0xff]
  %v5970 = vld [vmem:[%s5895 + $0x250] sm:$0xff]
  %v5971 = vld [vmem:[%s5895 + $0x258] sm:$0xff]
  %v5972 = vld [vmem:[%s5895 + $0x260] sm:$0xff]
  %v5973 = vld [vmem:[%s5895 + $0x268] sm:$0xff]
  %v5974 = vld [vmem:[%s5895 + $0x270] sm:$0xff]
  %v5975 = vld [vmem:[%s5895 + $0x278] sm:$0xff]
  %v5976 = vld [vmem:[%s5895 + $0x280] sm:$0xff]
  %v5977 = vld [vmem:[%s5895 + $0x288] sm:$0xff]
  %v5978 = vld [vmem:[%s5895 + $0x290] sm:$0xff]
  %v5979 = vld [vmem:[%s5895 + $0x298] sm:$0xff]
  %v5980 = vld [vmem:[%s5895 + $0x2a0] sm:$0xff]
  %v5981 = vld [vmem:[%s5895 + $0x2a8] sm:$0xff]
  %v5982 = vld [vmem:[%s5895 + $0x2b0] sm:$0xff]
  %v5983 = vld [vmem:[%s5895 + $0x2b8] sm:$0xff]
  %v5984 = vld [vmem:[%s5895 + $0x2c0] sm:$0xff]
  %v5985 = vld [vmem:[%s5895 + $0x2c8] sm:$0xff]
  %v5986 = vld [vmem:[%s5895 + $0x2d0] sm:$0xff]
  %v5987 = vld [vmem:[%s5895 + $0x2d8] sm:$0xff]
  %v5988 = vld [vmem:[%s5895 + $0x2e0] sm:$0xff]
  %v5989 = vld [vmem:[%s5895 + $0x2e8] sm:$0xff]
  %v5990 = vld [vmem:[%s5895 + $0x2f0] sm:$0xff]
  %v5991 = vld [vmem:[%s5895 + $0x2f8] sm:$0xff]
  %v5992 = vld [vmem:[%s5895 + $0x300] sm:$0xff]
  %v5993 = vld [vmem:[%s5895 + $0x308] sm:$0xff]
  %v5994 = vld [vmem:[%s5895 + $0x310] sm:$0xff]
  %v5995 = vld [vmem:[%s5895 + $0x318] sm:$0xff]
  %v5996 = vld [vmem:[%s5895 + $0x320] sm:$0xff]
  %v5997 = vld [vmem:[%s5895 + $0x328] sm:$0xff]
  %v5998 = vld [vmem:[%s5895 + $0x330] sm:$0xff]
  %v5999 = vld [vmem:[%s5895 + $0x338] sm:$0xff]
  %v6000 = vld [vmem:[%s5895 + $0x340] sm:$0xff]
  %v6001 = vld [vmem:[%s5895 + $0x348] sm:$0xff]
  %v6002 = vld [vmem:[%s5895 + $0x350] sm:$0xff]
  %v6003 = vld [vmem:[%s5895 + $0x358] sm:$0xff]
  %v6005 = vsel %vm88, %v5898, 0
  %v6008 = vsel %vm88, %v5901, 0
  %v6011 = vsel %vm88, %v5904, 0
  %v6014 = vsel %vm88, %v5907, 0
  %v6017 = vsel %vm88, %v5910, 0
  %v6020 = vsel %vm88, %v5913, 0
  %v6023 = vsel %vm88, %v5916, 0
  %v6026 = vsel %vm88, %v5919, 0
  %v6029 = vsel %vm88, %v5922, 0
  %v6032 = vsel %vm88, %v5925, 0
  %v6035 = vsel %vm88, %v5928, 0
  %v6038 = vsel %vm88, %v5931, 0
  %v6041 = vsel %vm88, %v5934, 0
  %v6044 = vsel %vm88, %v5937, 0
  %v6047 = vsel %vm88, %v5940, 0
  %v6050 = vsel %vm88, %v5943, 0
  %v6053 = vsel %vm88, %v5946, 0
  %v6056 = vsel %vm88, %v5949, 0
  %v6059 = vsel %vm88, %v5952, 0
  %v6062 = vsel %vm88, %v5955, 0
  %v6065 = vsel %vm88, %v5958, 0
  %v6068 = vsel %vm88, %v5961, 0
  %v6071 = vsel %vm88, %v5964, 0
  %v6074 = vsel %vm88, %v5967, 0
  %v6077 = vsel %vm88, %v5970, 0
  %v6080 = vsel %vm88, %v5973, 0
  %v6083 = vsel %vm88, %v5976, 0
  %v6086 = vsel %vm88, %v5979, 0
  %v6089 = vsel %vm88, %v5982, 0
  %v6092 = vsel %vm88, %v5985, 0
  %v6095 = vsel %vm88, %v5988, 0
  %v6098 = vsel %vm88, %v5991, 0
  %v6101 = vsel %vm88, %v5994, 0
  %v6104 = vsel %vm88, %v5997, 0
  %v6107 = vsel %vm88, %v6000, 0
  %v6110 = vsel %vm88, %v6003, 0
  %6112 = vmatprep.subr.mxu0 0.0
  %6113 = vmatpush1.msra.mxu0 %v457
  %6114 = vmatprep.subr.mxu0 0.0
  %6115 = vmatpush1.msra.mxu0 %v456
  %6116 = vmatprep.subr.mxu0 0.0
  %6117 = vmatpush1.msra.mxu0 %v455
  %6118 = vmatprep.subr.mxu0 0.0
  %6119 = vmatpush1.msra.mxu0 %v454
  %6120 = vmatprep.subr.mxu0 0.0
  %6121 = vmatpush1.msra.mxu0 %v453
  %6122 = vmatprep.subr.mxu0 0.0
  %6123 = vmatpush1.msra.mxu0 %v452
  %6124 = vmatprep.subr.mxu0 0.0
  %6125 = vmatpush1.msra.mxu0 %v451
  %6126 = vmatprep.subr.mxu0 0.0
  %6127 = vmatpush1.msra.mxu0 %v450
  %6128 = vmatprep.subr.mxu0 0.0
  %6129 = vmatpush1.msra.mxu0 %v449
  %6130 = vmatprep.subr.mxu0 0.0
  %6131 = vmatpush1.msra.mxu0 %v448
  %6132 = vmatprep.subr.mxu0 0.0
  %6133 = vmatpush1.msra.mxu0 %v447
  %6134 = vmatprep.subr.mxu0 0.0
  %6135 = vmatpush1.msra.mxu0 %v446
  %6136 = vmatprep.subr.mxu0 0.0
  %6137 = vmatpush1.msra.mxu0 %v445
  %6138 = vmatprep.subr.mxu0 0.0
  %6139 = vmatpush1.msra.mxu0 %v444
  %6140 = vmatprep.subr.mxu0 0.0
  %6141 = vmatpush1.msra.mxu0 %v443
  %6142 = vmatprep.subr.mxu0 0.0
  %6143 = vmatpush1.msra.mxu0 %v442
  %6144 = vmatprep.subr.mxu0 0.0
  %6145 = vmatpush2.msra.mxu0 %v473
  %6146 = vmatprep.subr.mxu0 0.0
  %6147 = vmatpush2.msra.mxu0 %v472
  %6148 = vmatprep.subr.mxu0 0.0
  %6149 = vmatpush2.msra.mxu0 %v471
  %6150 = vmatprep.subr.mxu0 0.0
  %6151 = vmatpush2.msra.mxu0 %v470
  %6152 = vmatprep.subr.mxu0 0.0
  %6153 = vmatpush2.msra.mxu0 %v469
  %6154 = vmatprep.subr.mxu0 0.0
  %6155 = vmatpush2.msra.mxu0 %v468
  %6156 = vmatprep.subr.mxu0 0.0
  %6157 = vmatpush2.msra.mxu0 %v467
  %6158 = vmatprep.subr.mxu0 0.0
  %6159 = vmatpush2.msra.mxu0 %v466
  %6160 = vmatprep.subr.mxu0 0.0
  %6161 = vmatpush2.msra.mxu0 %v465
  %6162 = vmatprep.subr.mxu0 0.0
  %6163 = vmatpush2.msra.mxu0 %v464
  %6164 = vmatprep.subr.mxu0 0.0
  %6165 = vmatpush2.msra.mxu0 %v463
  %6166 = vmatprep.subr.mxu0 0.0
  %6167 = vmatpush2.msra.mxu0 %v462
  %6168 = vmatprep.subr.mxu0 0.0
  %6169 = vmatpush2.msra.mxu0 %v461
  %6170 = vmatprep.subr.mxu0 0.0
  %6171 = vmatpush2.msra.mxu0 %v460
  %6172 = vmatprep.subr.mxu0 0.0
  %6173 = vmatpush2.msra.mxu0 %v459
  %6174 = vmatprep.subr.mxu0 0.0
  %6175 = vmatpush2.msra.mxu0 %v458
  %6176 = vmatprep.mubr.f32.mxu0 %v5897
  %6177 = vmatmul.mubr.f32.gmra.mxu0 %v5896
  %v6178 = vpop.f32.mrf.mxu0
  %v6179 = vadd.f32 0.0, %v6178
  %v6180 = vpop.f32.mrf.mxu0
  %6181 = vmatprep.mubr.f32.mxu0 %v5900
  %6182 = vmatmul.mubr.f32.gmra.mxu0 %v5899
  %v6183 = vpop.f32.mrf.mxu0
  %v6184 = vadd.f32 0.0, %v6183
  %v6185 = vpop.f32.mrf.mxu0
  %6186 = vmatprep.mubr.f32.mxu0 %v5903
  %6187 = vmatmul.mubr.f32.gmra.mxu0 %v5902
  %v6188 = vpop.f32.mrf.mxu0
  %v6189 = vadd.f32 0.0, %v6188
  %v6190 = vpop.f32.mrf.mxu0
  %6191 = vmatprep.mubr.f32.mxu0 %v5906
  %6192 = vmatmul.mubr.f32.gmra.mxu0 %v5905
  %v6193 = vpop.f32.mrf.mxu0
  %v6194 = vadd.f32 0.0, %v6193
  %v6195 = vpop.f32.mrf.mxu0
  %6196 = vmatprep.mubr.f32.mxu0 %v5909
  %6197 = vmatmul.mubr.f32.gmra.mxu0 %v5908
  %v6198 = vpop.f32.mrf.mxu0
  %v6199 = vadd.f32 0.0, %v6198
  %v6200 = vpop.f32.mrf.mxu0
  %6201 = vmatprep.mubr.f32.mxu0 %v5912
  %6202 = vmatmul.mubr.f32.gmra.mxu0 %v5911
  %v6203 = vpop.f32.mrf.mxu0
  %v6204 = vadd.f32 0.0, %v6203
  %v6205 = vpop.f32.mrf.mxu0
  %6206 = vmatprep.mubr.f32.mxu0 %v5915
  %6207 = vmatmul.mubr.f32.gmra.mxu0 %v5914
  %v6208 = vpop.f32.mrf.mxu0
  %v6209 = vadd.f32 0.0, %v6208
  %v6210 = vpop.f32.mrf.mxu0
  %6211 = vmatprep.mubr.f32.mxu0 %v5918
  %6212 = vmatmul.mubr.f32.gmra.mxu0 %v5917
  %v6213 = vpop.f32.mrf.mxu0
  %v6214 = vadd.f32 0.0, %v6213
  %v6215 = vpop.f32.mrf.mxu0
  %6216 = vmatprep.mubr.f32.mxu0 %v5921
  %6217 = vmatmul.mubr.f32.gmra.mxu0 %v5920
  %v6218 = vpop.f32.mrf.mxu0
  %v6219 = vadd.f32 0.0, %v6218
  %v6220 = vpop.f32.mrf.mxu0
  %6221 = vmatprep.mubr.f32.mxu0 %v5924
  %6222 = vmatmul.mubr.f32.gmra.mxu0 %v5923
  %v6223 = vpop.f32.mrf.mxu0
  %v6224 = vadd.f32 0.0, %v6223
  %v6225 = vpop.f32.mrf.mxu0
  %6226 = vmatprep.mubr.f32.mxu0 %v5927
  %6227 = vmatmul.mubr.f32.gmra.mxu0 %v5926
  %v6228 = vpop.f32.mrf.mxu0
  %v6229 = vadd.f32 0.0, %v6228
  %v6230 = vpop.f32.mrf.mxu0
  %6231 = vmatprep.mubr.f32.mxu0 %v5930
  %6232 = vmatmul.mubr.f32.gmra.mxu0 %v5929
  %v6233 = vpop.f32.mrf.mxu0
  %v6234 = vadd.f32 0.0, %v6233
  %v6235 = vpop.f32.mrf.mxu0
  %6236 = vmatprep.mubr.f32.mxu0 %v5933
  %6237 = vmatmul.mubr.f32.gmra.mxu0 %v5932
  %v6238 = vpop.f32.mrf.mxu0
  %v6239 = vadd.f32 0.0, %v6238
  %v6240 = vpop.f32.mrf.mxu0
  %6241 = vmatprep.mubr.f32.mxu0 %v5936
  %6242 = vmatmul.mubr.f32.gmra.mxu0 %v5935
  %v6243 = vpop.f32.mrf.mxu0
  %v6244 = vadd.f32 0.0, %v6243
  %v6245 = vpop.f32.mrf.mxu0
  %6246 = vmatprep.mubr.f32.mxu0 %v5939
  %6247 = vmatmul.mubr.f32.gmra.mxu0 %v5938
  %v6248 = vpop.f32.mrf.mxu0
  %v6249 = vadd.f32 0.0, %v6248
  %v6250 = vpop.f32.mrf.mxu0
  %6251 = vmatprep.mubr.f32.mxu0 %v5942
  %6252 = vmatmul.mubr.f32.gmra.mxu0 %v5941
  %v6253 = vpop.f32.mrf.mxu0
  %v6254 = vadd.f32 0.0, %v6253
  %v6255 = vpop.f32.mrf.mxu0
  %6256 = vmatprep.mubr.f32.mxu0 %v5945
  %6257 = vmatmul.mubr.f32.gmra.mxu0 %v5944
  %v6258 = vpop.f32.mrf.mxu0
  %v6259 = vadd.f32 0.0, %v6258
  %v6260 = vpop.f32.mrf.mxu0
  %6261 = vmatprep.mubr.f32.mxu0 %v5948
  %6262 = vmatmul.mubr.f32.gmra.mxu0 %v5947
  %v6263 = vpop.f32.mrf.mxu0
  %v6264 = vadd.f32 0.0, %v6263
  %v6265 = vpop.f32.mrf.mxu0
  %6266 = vmatprep.mubr.f32.mxu0 %v5951
  %6267 = vmatmul.mubr.f32.gmra.mxu0 %v5950
  %v6268 = vpop.f32.mrf.mxu0
  %v6269 = vadd.f32 0.0, %v6268
  %v6270 = vpop.f32.mrf.mxu0
  %6271 = vmatprep.mubr.f32.mxu0 %v5954
  %6272 = vmatmul.mubr.f32.gmra.mxu0 %v5953
  %v6273 = vpop.f32.mrf.mxu0
  %v6274 = vadd.f32 0.0, %v6273
  %v6275 = vpop.f32.mrf.mxu0
  %6276 = vmatprep.mubr.f32.mxu0 %v5957
  %6277 = vmatmul.mubr.f32.gmra.mxu0 %v5956
  %v6278 = vpop.f32.mrf.mxu0
  %v6279 = vadd.f32 0.0, %v6278
  %v6280 = vpop.f32.mrf.mxu0
  %6281 = vmatprep.mubr.f32.mxu0 %v5960
  %6282 = vmatmul.mubr.f32.gmra.mxu0 %v5959
  %v6283 = vpop.f32.mrf.mxu0
  %v6284 = vadd.f32 0.0, %v6283
  %v6285 = vpop.f32.mrf.mxu0
  %6286 = vmatprep.mubr.f32.mxu0 %v5963
  %6287 = vmatmul.mubr.f32.gmra.mxu0 %v5962
  %v6288 = vpop.f32.mrf.mxu0
  %v6289 = vadd.f32 0.0, %v6288
  %v6290 = vpop.f32.mrf.mxu0
  %6291 = vmatprep.mubr.f32.mxu0 %v5966
  %6292 = vmatmul.mubr.f32.gmra.mxu0 %v5965
  %v6293 = vpop.f32.mrf.mxu0
  %v6294 = vadd.f32 0.0, %v6293
  %v6295 = vpop.f32.mrf.mxu0
  %6296 = vmatprep.mubr.f32.mxu0 %v5969
  %6297 = vmatmul.mubr.f32.gmra.mxu0 %v5968
  %v6298 = vpop.f32.mrf.mxu0
  %v6299 = vadd.f32 0.0, %v6298
  %v6300 = vpop.f32.mrf.mxu0
  %6301 = vmatprep.mubr.f32.mxu0 %v5972
  %6302 = vmatmul.mubr.f32.gmra.mxu0 %v5971
  %v6303 = vpop.f32.mrf.mxu0
  %v6304 = vadd.f32 0.0, %v6303
  %v6305 = vpop.f32.mrf.mxu0
  %6306 = vmatprep.mubr.f32.mxu0 %v5975
  %6307 = vmatmul.mubr.f32.gmra.mxu0 %v5974
  %v6308 = vpop.f32.mrf.mxu0
  %v6309 = vadd.f32 0.0, %v6308
  %v6310 = vpop.f32.mrf.mxu0
  %6311 = vmatprep.mubr.f32.mxu0 %v5978
  %6312 = vmatmul.mubr.f32.gmra.mxu0 %v5977
  %v6313 = vpop.f32.mrf.mxu0
  %v6314 = vadd.f32 0.0, %v6313
  %v6315 = vpop.f32.mrf.mxu0
  %6316 = vmatprep.mubr.f32.mxu0 %v5981
  %6317 = vmatmul.mubr.f32.gmra.mxu0 %v5980
  %v6318 = vpop.f32.mrf.mxu0
  %v6319 = vadd.f32 0.0, %v6318
  %v6320 = vpop.f32.mrf.mxu0
  %6321 = vmatprep.mubr.f32.mxu0 %v5984
  %6322 = vmatmul.mubr.f32.gmra.mxu0 %v5983
  %v6323 = vpop.f32.mrf.mxu0
  %v6324 = vadd.f32 0.0, %v6323
  %v6325 = vpop.f32.mrf.mxu0
  %6326 = vmatprep.mubr.f32.mxu0 %v5987
  %6327 = vmatmul.mubr.f32.gmra.mxu0 %v5986
  %v6328 = vpop.f32.mrf.mxu0
  %v6329 = vadd.f32 0.0, %v6328
  %v6330 = vpop.f32.mrf.mxu0
  %6331 = vmatprep.mubr.f32.mxu0 %v5990
  %6332 = vmatmul.mubr.f32.gmra.mxu0 %v5989
  %v6333 = vpop.f32.mrf.mxu0
  %v6334 = vadd.f32 0.0, %v6333
  %v6335 = vpop.f32.mrf.mxu0
  %6336 = vmatprep.mubr.f32.mxu0 %v5993
  %6337 = vmatmul.mubr.f32.gmra.mxu0 %v5992
  %v6338 = vpop.f32.mrf.mxu0
  %v6339 = vadd.f32 0.0, %v6338
  %v6340 = vpop.f32.mrf.mxu0
  %6341 = vmatprep.mubr.f32.mxu0 %v5996
  %6342 = vmatmul.mubr.f32.gmra.mxu0 %v5995
  %v6343 = vpop.f32.mrf.mxu0
  %v6344 = vadd.f32 0.0, %v6343
  %v6345 = vpop.f32.mrf.mxu0
  %6346 = vmatprep.mubr.f32.mxu0 %v5999
  %6347 = vmatmul.mubr.f32.gmra.mxu0 %v5998
  %v6348 = vpop.f32.mrf.mxu0
  %v6349 = vadd.f32 0.0, %v6348
  %v6350 = vpop.f32.mrf.mxu0
  %6351 = vmatprep.mubr.f32.mxu0 %v6002
  %6352 = vmatmul.mubr.f32.gmra.mxu0 %v6001
  %v6353 = vpop.f32.mrf.mxu0
  %v6354 = vadd.f32 0.0, %v6353
  %v6355 = vpop.f32.mrf.mxu0
  %6356 = vdwg.mxu0
  %6357 = vmatprep.subr.mxu0 0.0
  %6358 = vmatpush1.msra.mxu0 0.0
  %6359 = vmatprep.subr.mxu0 0.0
  %6360 = vmatpush1.msra.mxu0 0.0
  %6361 = vmatprep.subr.mxu0 0.0
  %6362 = vmatpush1.msra.mxu0 0.0
  %6363 = vmatprep.subr.mxu0 0.0
  %6364 = vmatpush1.msra.mxu0 0.0
  %6365 = vmatprep.subr.mxu0 0.0
  %6366 = vmatpush1.msra.mxu0 0.0
  %6367 = vmatprep.subr.mxu0 0.0
  %6368 = vmatpush1.msra.mxu0 0.0
  %6369 = vmatprep.subr.mxu0 0.0
  %6370 = vmatpush1.msra.mxu0 0.0
  %6371 = vmatprep.subr.mxu0 0.0
  %6372 = vmatpush1.msra.mxu0 0.0
  %6373 = vmatprep.subr.mxu0 0.0
  %6374 = vmatpush1.msra.mxu0 0.0
  %6375 = vmatprep.subr.mxu0 0.0
  %6376 = vmatpush1.msra.mxu0 0.0
  %6377 = vmatprep.subr.mxu0 0.0
  %6378 = vmatpush1.msra.mxu0 0.0
  %6379 = vmatprep.subr.mxu0 0.0
  %6380 = vmatpush1.msra.mxu0 0.0
  %6381 = vmatprep.subr.mxu0 0.0
  %6382 = vmatpush1.msra.mxu0 %v477
  %6383 = vmatprep.subr.mxu0 0.0
  %6384 = vmatpush1.msra.mxu0 %v476
  %6385 = vmatprep.subr.mxu0 0.0
  %6386 = vmatpush1.msra.mxu0 %v475
  %6387 = vmatprep.subr.mxu0 0.0
  %6388 = vmatpush1.msra.mxu0 %v474
  %6389 = vmatprep.subr.mxu0 0.0
  %6390 = vmatpush2.msra.mxu0 0.0
  %6391 = vmatprep.subr.mxu0 0.0
  %6392 = vmatpush2.msra.mxu0 0.0
  %6393 = vmatprep.subr.mxu0 0.0
  %6394 = vmatpush2.msra.mxu0 0.0
  %6395 = vmatprep.subr.mxu0 0.0
  %6396 = vmatpush2.msra.mxu0 0.0
  %6397 = vmatprep.subr.mxu0 0.0
  %6398 = vmatpush2.msra.mxu0 0.0
  %6399 = vmatprep.subr.mxu0 0.0
  %6400 = vmatpush2.msra.mxu0 0.0
  %6401 = vmatprep.subr.mxu0 0.0
  %6402 = vmatpush2.msra.mxu0 0.0
  %6403 = vmatprep.subr.mxu0 0.0
  %6404 = vmatpush2.msra.mxu0 0.0
  %6405 = vmatprep.subr.mxu0 0.0
  %6406 = vmatpush2.msra.mxu0 0.0
  %6407 = vmatprep.subr.mxu0 0.0
  %6408 = vmatpush2.msra.mxu0 0.0
  %6409 = vmatprep.subr.mxu0 0.0
  %6410 = vmatpush2.msra.mxu0 0.0
  %6411 = vmatprep.subr.mxu0 0.0
  %6412 = vmatpush2.msra.mxu0 0.0
  %6413 = vmatprep.subr.mxu0 0.0
  %6414 = vmatpush2.msra.mxu0 0.0
  %6415 = vmatprep.subr.mxu0 0.0
  %6416 = vmatpush2.msra.mxu0 0.0
  %6417 = vmatprep.subr.mxu0 0.0
  %6418 = vmatpush2.msra.mxu0 0.0
  %6419 = vmatprep.subr.mxu0 0.0
  %6420 = vmatpush2.msra.mxu0 0.0
  %6421 = vmatprep.mubr.f32.mxu0 0.0
  %6422 = vmatmul.mubr.f32.gmra.mxu0 %v6005
  %v6423 = vpop.f32.mrf.mxu0
  %v6424 = vadd.f32 %v6179, %v6423
  %v6425 = vpop.f32.mrf.mxu0
  %6426 = vmatprep.mubr.f32.mxu0 0.0
  %6427 = vmatmul.mubr.f32.gmra.mxu0 %v6008
  %v6428 = vpop.f32.mrf.mxu0
  %v6429 = vadd.f32 %v6184, %v6428
  %v6430 = vpop.f32.mrf.mxu0
  %6431 = vmatprep.mubr.f32.mxu0 0.0
  %6432 = vmatmul.mubr.f32.gmra.mxu0 %v6011
  %v6433 = vpop.f32.mrf.mxu0
  %v6434 = vadd.f32 %v6189, %v6433
  %v6435 = vpop.f32.mrf.mxu0
  %6436 = vmatprep.mubr.f32.mxu0 0.0
  %6437 = vmatmul.mubr.f32.gmra.mxu0 %v6014
  %v6438 = vpop.f32.mrf.mxu0
  %v6439 = vadd.f32 %v6194, %v6438
  %v6440 = vpop.f32.mrf.mxu0
  %6441 = vmatprep.mubr.f32.mxu0 0.0
  %6442 = vmatmul.mubr.f32.gmra.mxu0 %v6017
  %v6443 = vpop.f32.mrf.mxu0
  %v6444 = vadd.f32 %v6199, %v6443
  %v6445 = vpop.f32.mrf.mxu0
  %6446 = vmatprep.mubr.f32.mxu0 0.0
  %6447 = vmatmul.mubr.f32.gmra.mxu0 %v6020
  %v6448 = vpop.f32.mrf.mxu0
  %v6449 = vadd.f32 %v6204, %v6448
  %v6450 = vpop.f32.mrf.mxu0
  %6451 = vmatprep.mubr.f32.mxu0 0.0
  %6452 = vmatmul.mubr.f32.gmra.mxu0 %v6023
  %v6453 = vpop.f32.mrf.mxu0
  %v6454 = vadd.f32 %v6209, %v6453
  %v6455 = vpop.f32.mrf.mxu0
  %6456 = vmatprep.mubr.f32.mxu0 0.0
  %6457 = vmatmul.mubr.f32.gmra.mxu0 %v6026
  %v6458 = vpop.f32.mrf.mxu0
  %v6459 = vadd.f32 %v6214, %v6458
  %v6460 = vpop.f32.mrf.mxu0
  %6461 = vmatprep.mubr.f32.mxu0 0.0
  %6462 = vmatmul.mubr.f32.gmra.mxu0 %v6029
  %v6463 = vpop.f32.mrf.mxu0
  %v6464 = vadd.f32 %v6219, %v6463
  %v6465 = vpop.f32.mrf.mxu0
  %6466 = vmatprep.mubr.f32.mxu0 0.0
  %6467 = vmatmul.mubr.f32.gmra.mxu0 %v6032
  %v6468 = vpop.f32.mrf.mxu0
  %v6469 = vadd.f32 %v6224, %v6468
  %v6470 = vpop.f32.mrf.mxu0
  %6471 = vmatprep.mubr.f32.mxu0 0.0
  %6472 = vmatmul.mubr.f32.gmra.mxu0 %v6035
  %v6473 = vpop.f32.mrf.mxu0
  %v6474 = vadd.f32 %v6229, %v6473
  %v6475 = vpop.f32.mrf.mxu0
  %6476 = vmatprep.mubr.f32.mxu0 0.0
  %6477 = vmatmul.mubr.f32.gmra.mxu0 %v6038
  %v6478 = vpop.f32.mrf.mxu0
  %v6479 = vadd.f32 %v6234, %v6478
  %v6480 = vpop.f32.mrf.mxu0
  %6481 = vmatprep.mubr.f32.mxu0 0.0
  %6482 = vmatmul.mubr.f32.gmra.mxu0 %v6041
  %v6483 = vpop.f32.mrf.mxu0
  %v6484 = vadd.f32 %v6239, %v6483
  %v6485 = vpop.f32.mrf.mxu0
  %6486 = vmatprep.mubr.f32.mxu0 0.0
  %6487 = vmatmul.mubr.f32.gmra.mxu0 %v6044
  %v6488 = vpop.f32.mrf.mxu0
  %v6489 = vadd.f32 %v6244, %v6488
  %v6490 = vpop.f32.mrf.mxu0
  %6491 = vmatprep.mubr.f32.mxu0 0.0
  %6492 = vmatmul.mubr.f32.gmra.mxu0 %v6047
  %v6493 = vpop.f32.mrf.mxu0
  %v6494 = vadd.f32 %v6249, %v6493
  %v6495 = vpop.f32.mrf.mxu0
  %6496 = vmatprep.mubr.f32.mxu0 0.0
  %6497 = vmatmul.mubr.f32.gmra.mxu0 %v6050
  %v6498 = vpop.f32.mrf.mxu0
  %v6499 = vadd.f32 %v6254, %v6498
  %v6500 = vpop.f32.mrf.mxu0
  %6501 = vmatprep.mubr.f32.mxu0 0.0
  %6502 = vmatmul.mubr.f32.gmra.mxu0 %v6053
  %v6503 = vpop.f32.mrf.mxu0
  %v6504 = vadd.f32 %v6259, %v6503
  %v6505 = vpop.f32.mrf.mxu0
  %6506 = vmatprep.mubr.f32.mxu0 0.0
  %6507 = vmatmul.mubr.f32.gmra.mxu0 %v6056
  %v6508 = vpop.f32.mrf.mxu0
  %v6509 = vadd.f32 %v6264, %v6508
  %v6510 = vpop.f32.mrf.mxu0
  %6511 = vmatprep.mubr.f32.mxu0 0.0
  %6512 = vmatmul.mubr.f32.gmra.mxu0 %v6059
  %v6513 = vpop.f32.mrf.mxu0
  %v6514 = vadd.f32 %v6269, %v6513
  %v6515 = vpop.f32.mrf.mxu0
  %6516 = vmatprep.mubr.f32.mxu0 0.0
  %6517 = vmatmul.mubr.f32.gmra.mxu0 %v6062
  %v6518 = vpop.f32.mrf.mxu0
  %v6519 = vadd.f32 %v6274, %v6518
  %v6520 = vpop.f32.mrf.mxu0
  %6521 = vmatprep.mubr.f32.mxu0 0.0
  %6522 = vmatmul.mubr.f32.gmra.mxu0 %v6065
  %v6523 = vpop.f32.mrf.mxu0
  %v6524 = vadd.f32 %v6279, %v6523
  %v6525 = vpop.f32.mrf.mxu0
  %6526 = vmatprep.mubr.f32.mxu0 0.0
  %6527 = vmatmul.mubr.f32.gmra.mxu0 %v6068
  %v6528 = vpop.f32.mrf.mxu0
  %v6529 = vadd.f32 %v6284, %v6528
  %v6530 = vpop.f32.mrf.mxu0
  %6531 = vmatprep.mubr.f32.mxu0 0.0
  %6532 = vmatmul.mubr.f32.gmra.mxu0 %v6071
  %v6533 = vpop.f32.mrf.mxu0
  %v6534 = vadd.f32 %v6289, %v6533
  %v6535 = vpop.f32.mrf.mxu0
  %6536 = vmatprep.mubr.f32.mxu0 0.0
  %6537 = vmatmul.mubr.f32.gmra.mxu0 %v6074
  %v6538 = vpop.f32.mrf.mxu0
  %v6539 = vadd.f32 %v6294, %v6538
  %v6540 = vpop.f32.mrf.mxu0
  %6541 = vmatprep.mubr.f32.mxu0 0.0
  %6542 = vmatmul.mubr.f32.gmra.mxu0 %v6077
  %v6543 = vpop.f32.mrf.mxu0
  %v6544 = vadd.f32 %v6299, %v6543
  %v6545 = vpop.f32.mrf.mxu0
  %6546 = vmatprep.mubr.f32.mxu0 0.0
  %6547 = vmatmul.mubr.f32.gmra.mxu0 %v6080
  %v6548 = vpop.f32.mrf.mxu0
  %v6549 = vadd.f32 %v6304, %v6548
  %v6550 = vpop.f32.mrf.mxu0
  %6551 = vmatprep.mubr.f32.mxu0 0.0
  %6552 = vmatmul.mubr.f32.gmra.mxu0 %v6083
  %v6553 = vpop.f32.mrf.mxu0
  %v6554 = vadd.f32 %v6309, %v6553
  %v6555 = vpop.f32.mrf.mxu0
  %6556 = vmatprep.mubr.f32.mxu0 0.0
  %6557 = vmatmul.mubr.f32.gmra.mxu0 %v6086
  %v6558 = vpop.f32.mrf.mxu0
  %v6559 = vadd.f32 %v6314, %v6558
  %v6560 = vpop.f32.mrf.mxu0
  %6561 = vmatprep.mubr.f32.mxu0 0.0
  %6562 = vmatmul.mubr.f32.gmra.mxu0 %v6089
  %v6563 = vpop.f32.mrf.mxu0
  %v6564 = vadd.f32 %v6319, %v6563
  %v6565 = vpop.f32.mrf.mxu0
  %6566 = vmatprep.mubr.f32.mxu0 0.0
  %6567 = vmatmul.mubr.f32.gmra.mxu0 %v6092
  %v6568 = vpop.f32.mrf.mxu0
  %v6569 = vadd.f32 %v6324, %v6568
  %v6570 = vpop.f32.mrf.mxu0
  %6571 = vmatprep.mubr.f32.mxu0 0.0
  %6572 = vmatmul.mubr.f32.gmra.mxu0 %v6095
  %v6573 = vpop.f32.mrf.mxu0
  %v6574 = vadd.f32 %v6329, %v6573
  %v6575 = vpop.f32.mrf.mxu0
  %6576 = vmatprep.mubr.f32.mxu0 0.0
  %6577 = vmatmul.mubr.f32.gmra.mxu0 %v6098
  %v6578 = vpop.f32.mrf.mxu0
  %v6579 = vadd.f32 %v6334, %v6578
  %v6580 = vpop.f32.mrf.mxu0
  %6581 = vmatprep.mubr.f32.mxu0 0.0
  %6582 = vmatmul.mubr.f32.gmra.mxu0 %v6101
  %v6583 = vpop.f32.mrf.mxu0
  %v6584 = vadd.f32 %v6339, %v6583
  %v6585 = vpop.f32.mrf.mxu0
  %6586 = vmatprep.mubr.f32.mxu0 0.0
  %6587 = vmatmul.mubr.f32.gmra.mxu0 %v6104
  %v6588 = vpop.f32.mrf.mxu0
  %v6589 = vadd.f32 %v6344, %v6588
  %v6590 = vpop.f32.mrf.mxu0
  %6591 = vmatprep.mubr.f32.mxu0 0.0
  %6592 = vmatmul.mubr.f32.gmra.mxu0 %v6107
  %v6593 = vpop.f32.mrf.mxu0
  %v6594 = vadd.f32 %v6349, %v6593
  %v6595 = vpop.f32.mrf.mxu0
  %6596 = vmatprep.mubr.f32.mxu0 0.0
  %6597 = vmatmul.mubr.f32.gmra.mxu0 %v6110
  %v6598 = vpop.f32.mrf.mxu0
  %v6599 = vadd.f32 %v6354, %v6598
  %v6600 = vpop.f32.mrf.mxu0
  %6601 = vdwg.mxu0
  %s6602 = scalar_lea.vmem %s4, 40
  %v6603 = vld [vmem:[%s6602] sm:$0xff]
  %v6605 = vsel %vm1894, %v6424, 0
  %v6608 = vsel %vm1894, %v6429, 0
  %v6611 = vsel %vm1894, %v6434, 0
  %v6614 = vsel %vm1894, %v6439, 0
  %v6617 = vsel %vm1894, %v6444, 0
  %v6620 = vsel %vm1894, %v6449, 0
  %v6623 = vsel %vm1894, %v6454, 0
  %v6626 = vsel %vm1894, %v6459, 0
  %v6629 = vsel %vm1894, %v6464, 0
  %v6632 = vsel %vm1894, %v6469, 0
  %v6635 = vsel %vm1894, %v6474, 0
  %v6638 = vsel %vm1894, %v6479, 0
  %v6641 = vsel %vm1894, %v6484, 0
  %v6644 = vsel %vm1894, %v6489, 0
  %v6647 = vsel %vm1894, %v6494, 0
  %v6650 = vsel %vm1894, %v6499, 0
  %v6653 = vsel %vm1894, %v6504, 0
  %v6656 = vsel %vm1894, %v6509, 0
  %v6659 = vsel %vm1894, %v6514, 0
  %v6662 = vsel %vm1894, %v6519, 0
  %v6665 = vsel %vm1894, %v6524, 0
  %v6668 = vsel %vm1894, %v6529, 0
  %v6671 = vsel %vm1894, %v6534, 0
  %v6674 = vsel %vm1894, %v6539, 0
  %v6677 = vsel %vm1894, %v6544, 0
  %v6680 = vsel %vm1894, %v6549, 0
  %v6683 = vsel %vm1894, %v6554, 0
  %v6686 = vsel %vm1894, %v6559, 0
  %v6689 = vsel %vm1894, %v6564, 0
  %v6692 = vsel %vm1894, %v6569, 0
  %v6695 = vsel %vm1894, %v6574, 0
  %v6698 = vsel %vm1894, %v6579, 0
  %v6701 = vsel %vm1894, %v6584, 0
  %v6704 = vsel %vm1894, %v6589, 0
  %v6707 = vsel %vm1894, %v6594, 0
  %v6710 = vsel %vm1894, %v6599, 0
  %6712 = vmatprep.subr.mxu0 0.0
  %6713 = vmatpush1.msra.mxu0 0.0
  %6714 = vmatprep.subr.mxu0 0.0
  %6715 = vmatpush1.msra.mxu0 0.0
  %6716 = vmatprep.subr.mxu0 0.0
  %6717 = vmatpush1.msra.mxu0 0.0
  %6718 = vmatprep.subr.mxu0 0.0
  %6719 = vmatpush1.msra.mxu0 0.0
  %6720 = vmatprep.subr.mxu0 0.0
  %6721 = vmatpush1.msra.mxu0 0.0
  %6722 = vmatprep.subr.mxu0 0.0
  %6723 = vmatpush1.msra.mxu0 0.0
  %6724 = vmatprep.subr.mxu0 0.0
  %6725 = vmatpush1.msra.mxu0 0.0
  %6726 = vmatprep.subr.mxu0 0.0
  %6727 = vmatpush1.msra.mxu0 0.0
  %6728 = vmatprep.subr.mxu0 0.0
  %6729 = vmatpush1.msra.mxu0 0.0
  %6730 = vmatprep.subr.mxu0 0.0
  %6731 = vmatpush1.msra.mxu0 0.0
  %6732 = vmatprep.subr.mxu0 0.0
  %6733 = vmatpush1.msra.mxu0 0.0
  %6734 = vmatprep.subr.mxu0 0.0
  %6735 = vmatpush1.msra.mxu0 0.0
  %6736 = vmatprep.subr.mxu0 0.0
  %6737 = vmatpush1.msra.mxu0 0.0
  %6738 = vmatprep.subr.mxu0 0.0
  %6739 = vmatpush1.msra.mxu0 0.0
  %6740 = vmatprep.subr.mxu0 0.0
  %6741 = vmatpush1.msra.mxu0 0.0
  %6742 = vmatprep.subr.mxu0 0.0
  %6743 = vmatpush1.msra.mxu0 %v6603
  %6744 = vmatprep.subr.mxu0 0.0
  %6745 = vmatpush2.msra.mxu0 0.0
  %6746 = vmatprep.subr.mxu0 0.0
  %6747 = vmatpush2.msra.mxu0 0.0
  %6748 = vmatprep.subr.mxu0 0.0
  %6749 = vmatpush2.msra.mxu0 0.0
  %6750 = vmatprep.subr.mxu0 0.0
  %6751 = vmatpush2.msra.mxu0 0.0
  %6752 = vmatprep.subr.mxu0 0.0
  %6753 = vmatpush2.msra.mxu0 0.0
  %6754 = vmatprep.subr.mxu0 0.0
  %6755 = vmatpush2.msra.mxu0 0.0
  %6756 = vmatprep.subr.mxu0 0.0
  %6757 = vmatpush2.msra.mxu0 0.0
  %6758 = vmatprep.subr.mxu0 0.0
  %6759 = vmatpush2.msra.mxu0 0.0
  %6760 = vmatprep.subr.mxu0 0.0
  %6761 = vmatpush2.msra.mxu0 0.0
  %6762 = vmatprep.subr.mxu0 0.0
  %6763 = vmatpush2.msra.mxu0 0.0
  %6764 = vmatprep.subr.mxu0 0.0
  %6765 = vmatpush2.msra.mxu0 0.0
  %6766 = vmatprep.subr.mxu0 0.0
  %6767 = vmatpush2.msra.mxu0 0.0
  %6768 = vmatprep.subr.mxu0 0.0
  %6769 = vmatpush2.msra.mxu0 0.0
  %6770 = vmatprep.subr.mxu0 0.0
  %6771 = vmatpush2.msra.mxu0 0.0
  %6772 = vmatprep.subr.mxu0 0.0
  %6773 = vmatpush2.msra.mxu0 0.0
  %6774 = vmatprep.subr.mxu0 0.0
  %6775 = vmatpush2.msra.mxu0 0.0
  %6776 = vmatprep.mubr.f32.mxu0 0.0
  %6777 = vmatmul.mubr.f32.gmra.mxu0 %v6605
  %v6778 = vpop.f32.mrf.mxu0
  %v6779 = vadd.f32 0.0, %v6778
  %v6780 = vpop.f32.mrf.mxu0
  %6781 = vmatprep.mubr.f32.mxu0 0.0
  %6782 = vmatmul.mubr.f32.gmra.mxu0 %v6608
  %v6783 = vpop.f32.mrf.mxu0
  %v6784 = vadd.f32 0.0, %v6783
  %v6785 = vpop.f32.mrf.mxu0
  %6786 = vmatprep.mubr.f32.mxu0 0.0
  %6787 = vmatmul.mubr.f32.gmra.mxu0 %v6611
  %v6788 = vpop.f32.mrf.mxu0
  %v6789 = vadd.f32 0.0, %v6788
  %v6790 = vpop.f32.mrf.mxu0
  %6791 = vmatprep.mubr.f32.mxu0 0.0
  %6792 = vmatmul.mubr.f32.gmra.mxu0 %v6614
  %v6793 = vpop.f32.mrf.mxu0
  %v6794 = vadd.f32 0.0, %v6793
  %v6795 = vpop.f32.mrf.mxu0
  %6796 = vmatprep.mubr.f32.mxu0 0.0
  %6797 = vmatmul.mubr.f32.gmra.mxu0 %v6617
  %v6798 = vpop.f32.mrf.mxu0
  %v6799 = vadd.f32 0.0, %v6798
  %v6800 = vpop.f32.mrf.mxu0
  %6801 = vmatprep.mubr.f32.mxu0 0.0
  %6802 = vmatmul.mubr.f32.gmra.mxu0 %v6620
  %v6803 = vpop.f32.mrf.mxu0
  %v6804 = vadd.f32 0.0, %v6803
  %v6805 = vpop.f32.mrf.mxu0
  %6806 = vmatprep.mubr.f32.mxu0 0.0
  %6807 = vmatmul.mubr.f32.gmra.mxu0 %v6623
  %v6808 = vpop.f32.mrf.mxu0
  %v6809 = vadd.f32 0.0, %v6808
  %v6810 = vpop.f32.mrf.mxu0
  %6811 = vmatprep.mubr.f32.mxu0 0.0
  %6812 = vmatmul.mubr.f32.gmra.mxu0 %v6626
  %v6813 = vpop.f32.mrf.mxu0
  %v6814 = vadd.f32 0.0, %v6813
  %v6815 = vpop.f32.mrf.mxu0
  %6816 = vmatprep.mubr.f32.mxu0 0.0
  %6817 = vmatmul.mubr.f32.gmra.mxu0 %v6629
  %v6818 = vpop.f32.mrf.mxu0
  %v6819 = vadd.f32 0.0, %v6818
  %v6820 = vpop.f32.mrf.mxu0
  %6821 = vmatprep.mubr.f32.mxu0 0.0
  %6822 = vmatmul.mubr.f32.gmra.mxu0 %v6632
  %v6823 = vpop.f32.mrf.mxu0
  %v6824 = vadd.f32 0.0, %v6823
  %v6825 = vpop.f32.mrf.mxu0
  %6826 = vmatprep.mubr.f32.mxu0 0.0
  %6827 = vmatmul.mubr.f32.gmra.mxu0 %v6635
  %v6828 = vpop.f32.mrf.mxu0
  %v6829 = vadd.f32 0.0, %v6828
  %v6830 = vpop.f32.mrf.mxu0
  %6831 = vmatprep.mubr.f32.mxu0 0.0
  %6832 = vmatmul.mubr.f32.gmra.mxu0 %v6638
  %v6833 = vpop.f32.mrf.mxu0
  %v6834 = vadd.f32 0.0, %v6833
  %v6835 = vpop.f32.mrf.mxu0
  %6836 = vmatprep.mubr.f32.mxu0 0.0
  %6837 = vmatmul.mubr.f32.gmra.mxu0 %v6641
  %v6838 = vpop.f32.mrf.mxu0
  %v6839 = vadd.f32 0.0, %v6838
  %v6840 = vpop.f32.mrf.mxu0
  %6841 = vmatprep.mubr.f32.mxu0 0.0
  %6842 = vmatmul.mubr.f32.gmra.mxu0 %v6644
  %v6843 = vpop.f32.mrf.mxu0
  %v6844 = vadd.f32 0.0, %v6843
  %v6845 = vpop.f32.mrf.mxu0
  %6846 = vmatprep.mubr.f32.mxu0 0.0
  %6847 = vmatmul.mubr.f32.gmra.mxu0 %v6647
  %v6848 = vpop.f32.mrf.mxu0
  %v6849 = vadd.f32 0.0, %v6848
  %v6850 = vpop.f32.mrf.mxu0
  %6851 = vmatprep.mubr.f32.mxu0 0.0
  %6852 = vmatmul.mubr.f32.gmra.mxu0 %v6650
  %v6853 = vpop.f32.mrf.mxu0
  %v6854 = vadd.f32 0.0, %v6853
  %v6855 = vpop.f32.mrf.mxu0
  %6856 = vmatprep.mubr.f32.mxu0 0.0
  %6857 = vmatmul.mubr.f32.gmra.mxu0 %v6653
  %v6858 = vpop.f32.mrf.mxu0
  %v6859 = vadd.f32 0.0, %v6858
  %v6860 = vpop.f32.mrf.mxu0
  %6861 = vmatprep.mubr.f32.mxu0 0.0
  %6862 = vmatmul.mubr.f32.gmra.mxu0 %v6656
  %v6863 = vpop.f32.mrf.mxu0
  %v6864 = vadd.f32 0.0, %v6863
  %v6865 = vpop.f32.mrf.mxu0
  %6866 = vmatprep.mubr.f32.mxu0 0.0
  %6867 = vmatmul.mubr.f32.gmra.mxu0 %v6659
  %v6868 = vpop.f32.mrf.mxu0
  %v6869 = vadd.f32 0.0, %v6868
  %v6870 = vpop.f32.mrf.mxu0
  %6871 = vmatprep.mubr.f32.mxu0 0.0
  %6872 = vmatmul.mubr.f32.gmra.mxu0 %v6662
  %v6873 = vpop.f32.mrf.mxu0
  %v6874 = vadd.f32 0.0, %v6873
  %v6875 = vpop.f32.mrf.mxu0
  %6876 = vmatprep.mubr.f32.mxu0 0.0
  %6877 = vmatmul.mubr.f32.gmra.mxu0 %v6665
  %v6878 = vpop.f32.mrf.mxu0
  %v6879 = vadd.f32 0.0, %v6878
  %v6880 = vpop.f32.mrf.mxu0
  %6881 = vmatprep.mubr.f32.mxu0 0.0
  %6882 = vmatmul.mubr.f32.gmra.mxu0 %v6668
  %v6883 = vpop.f32.mrf.mxu0
  %v6884 = vadd.f32 0.0, %v6883
  %v6885 = vpop.f32.mrf.mxu0
  %6886 = vmatprep.mubr.f32.mxu0 0.0
  %6887 = vmatmul.mubr.f32.gmra.mxu0 %v6671
  %v6888 = vpop.f32.mrf.mxu0
  %v6889 = vadd.f32 0.0, %v6888
  %v6890 = vpop.f32.mrf.mxu0
  %6891 = vmatprep.mubr.f32.mxu0 0.0
  %6892 = vmatmul.mubr.f32.gmra.mxu0 %v6674
  %v6893 = vpop.f32.mrf.mxu0
  %v6894 = vadd.f32 0.0, %v6893
  %v6895 = vpop.f32.mrf.mxu0
  %6896 = vmatprep.mubr.f32.mxu0 0.0
  %6897 = vmatmul.mubr.f32.gmra.mxu0 %v6677
  %v6898 = vpop.f32.mrf.mxu0
  %v6899 = vadd.f32 0.0, %v6898
  %v6900 = vpop.f32.mrf.mxu0
  %6901 = vmatprep.mubr.f32.mxu0 0.0
  %6902 = vmatmul.mubr.f32.gmra.mxu0 %v6680
  %v6903 = vpop.f32.mrf.mxu0
  %v6904 = vadd.f32 0.0, %v6903
  %v6905 = vpop.f32.mrf.mxu0
  %6906 = vmatprep.mubr.f32.mxu0 0.0
  %6907 = vmatmul.mubr.f32.gmra.mxu0 %v6683
  %v6908 = vpop.f32.mrf.mxu0
  %v6909 = vadd.f32 0.0, %v6908
  %v6910 = vpop.f32.mrf.mxu0
  %6911 = vmatprep.mubr.f32.mxu0 0.0
  %6912 = vmatmul.mubr.f32.gmra.mxu0 %v6686
  %v6913 = vpop.f32.mrf.mxu0
  %v6914 = vadd.f32 0.0, %v6913
  %v6915 = vpop.f32.mrf.mxu0
  %6916 = vmatprep.mubr.f32.mxu0 0.0
  %6917 = vmatmul.mubr.f32.gmra.mxu0 %v6689
  %v6918 = vpop.f32.mrf.mxu0
  %v6919 = vadd.f32 0.0, %v6918
  %v6920 = vpop.f32.mrf.mxu0
  %6921 = vmatprep.mubr.f32.mxu0 0.0
  %6922 = vmatmul.mubr.f32.gmra.mxu0 %v6692
  %v6923 = vpop.f32.mrf.mxu0
  %v6924 = vadd.f32 0.0, %v6923
  %v6925 = vpop.f32.mrf.mxu0
  %6926 = vmatprep.mubr.f32.mxu0 0.0
  %6927 = vmatmul.mubr.f32.gmra.mxu0 %v6695
  %v6928 = vpop.f32.mrf.mxu0
  %v6929 = vadd.f32 0.0, %v6928
  %v6930 = vpop.f32.mrf.mxu0
  %6931 = vmatprep.mubr.f32.mxu0 0.0
  %6932 = vmatmul.mubr.f32.gmra.mxu0 %v6698
  %v6933 = vpop.f32.mrf.mxu0
  %v6934 = vadd.f32 0.0, %v6933
  %v6935 = vpop.f32.mrf.mxu0
  %6936 = vmatprep.mubr.f32.mxu0 0.0
  %6937 = vmatmul.mubr.f32.gmra.mxu0 %v6701
  %v6938 = vpop.f32.mrf.mxu0
  %v6939 = vadd.f32 0.0, %v6938
  %v6940 = vpop.f32.mrf.mxu0
  %6941 = vmatprep.mubr.f32.mxu0 0.0
  %6942 = vmatmul.mubr.f32.gmra.mxu0 %v6704
  %v6943 = vpop.f32.mrf.mxu0
  %v6944 = vadd.f32 0.0, %v6943
  %v6945 = vpop.f32.mrf.mxu0
  %6946 = vmatprep.mubr.f32.mxu0 0.0
  %6947 = vmatmul.mubr.f32.gmra.mxu0 %v6707
  %v6948 = vpop.f32.mrf.mxu0
  %v6949 = vadd.f32 0.0, %v6948
  %v6950 = vpop.f32.mrf.mxu0
  %6951 = vmatprep.mubr.f32.mxu0 0.0
  %6952 = vmatmul.mubr.f32.gmra.mxu0 %v6710
  %v6953 = vpop.f32.mrf.mxu0
  %v6954 = vadd.f32 0.0, %v6953
  %v6955 = vpop.f32.mrf.mxu0
  %6956 = vdwg.mxu0
  %v6957 = vadd.f32 %v5859, %v6779
  %v6958 = vadd.f32 %v5860, %v6784
  %v6959 = vadd.f32 %v5861, %v6789
  %v6960 = vadd.f32 %v5862, %v6794
  %v6961 = vadd.f32 %v5863, %v6799
  %v6962 = vadd.f32 %v5864, %v6804
  %v6963 = vadd.f32 %v5865, %v6809
  %v6964 = vadd.f32 %v5866, %v6814
  %v6965 = vadd.f32 %v5867, %v6819
  %v6966 = vadd.f32 %v5868, %v6824
  %v6967 = vadd.f32 %v5869, %v6829
  %v6968 = vadd.f32 %v5870, %v6834
  %v6969 = vadd.f32 %v5871, %v6839
  %v6970 = vadd.f32 %v5872, %v6844
  %v6971 = vadd.f32 %v5873, %v6849
  %v6972 = vadd.f32 %v5874, %v6854
  %v6973 = vadd.f32 %v5875, %v6859
  %v6974 = vadd.f32 %v5876, %v6864
  %v6975 = vadd.f32 %v5877, %v6869
  %v6976 = vadd.f32 %v5878, %v6874
  %v6977 = vadd.f32 %v5879, %v6879
  %v6978 = vadd.f32 %v5880, %v6884
  %v6979 = vadd.f32 %v5881, %v6889
  %v6980 = vadd.f32 %v5882, %v6894
  %v6981 = vadd.f32 %v5883, %v6899
  %v6982 = vadd.f32 %v5884, %v6904
  %v6983 = vadd.f32 %v5885, %v6909
  %v6984 = vadd.f32 %v5886, %v6914
  %v6985 = vadd.f32 %v5887, %v6919
  %v6986 = vadd.f32 %v5888, %v6924
  %v6987 = vadd.f32 %v5889, %v6929
  %v6988 = vadd.f32 %v5890, %v6934
  %v6989 = vadd.f32 %v5891, %v6939
  %v6990 = vadd.f32 %v5892, %v6944
  %v6991 = vadd.f32 %v5893, %v6949
  %v6992 = vadd.f32 %v5894, %v6954
  %s6993 = scalar_lea.vmem %s3, 5184
  %v6994 = vld [vmem:[%s6993] sm:$0xff]
  %v6995 = vld [vmem:[%s6993 + $0x8] sm:$0xff]
  %v6996 = vld [vmem:[%s6993 + $0x10] sm:$0xff]
  %v6997 = vld [vmem:[%s6993 + $0x18] sm:$0xff]
  %v6998 = vld [vmem:[%s6993 + $0x20] sm:$0xff]
  %v6999 = vld [vmem:[%s6993 + $0x28] sm:$0xff]
  %v7000 = vld [vmem:[%s6993 + $0x30] sm:$0xff]
  %v7001 = vld [vmem:[%s6993 + $0x38] sm:$0xff]
  %v7002 = vld [vmem:[%s6993 + $0x40] sm:$0xff]
  %v7003 = vld [vmem:[%s6993 + $0x48] sm:$0xff]
  %v7004 = vld [vmem:[%s6993 + $0x50] sm:$0xff]
  %v7005 = vld [vmem:[%s6993 + $0x58] sm:$0xff]
  %v7006 = vld [vmem:[%s6993 + $0x60] sm:$0xff]
  %v7007 = vld [vmem:[%s6993 + $0x68] sm:$0xff]
  %v7008 = vld [vmem:[%s6993 + $0x70] sm:$0xff]
  %v7009 = vld [vmem:[%s6993 + $0x78] sm:$0xff]
  %v7010 = vld [vmem:[%s6993 + $0x80] sm:$0xff]
  %v7011 = vld [vmem:[%s6993 + $0x88] sm:$0xff]
  %v7012 = vld [vmem:[%s6993 + $0x90] sm:$0xff]
  %v7013 = vld [vmem:[%s6993 + $0x98] sm:$0xff]
  %v7014 = vld [vmem:[%s6993 + $0xa0] sm:$0xff]
  %v7015 = vld [vmem:[%s6993 + $0xa8] sm:$0xff]
  %v7016 = vld [vmem:[%s6993 + $0xb0] sm:$0xff]
  %v7017 = vld [vmem:[%s6993 + $0xb8] sm:$0xff]
  %v7018 = vld [vmem:[%s6993 + $0xc0] sm:$0xff]
  %v7019 = vld [vmem:[%s6993 + $0xc8] sm:$0xff]
  %v7020 = vld [vmem:[%s6993 + $0xd0] sm:$0xff]
  %v7021 = vld [vmem:[%s6993 + $0xd8] sm:$0xff]
  %v7022 = vld [vmem:[%s6993 + $0xe0] sm:$0xff]
  %v7023 = vld [vmem:[%s6993 + $0xe8] sm:$0xff]
  %v7024 = vld [vmem:[%s6993 + $0xf0] sm:$0xff]
  %v7025 = vld [vmem:[%s6993 + $0xf8] sm:$0xff]
  %v7026 = vld [vmem:[%s6993 + $0x100] sm:$0xff]
  %v7027 = vld [vmem:[%s6993 + $0x108] sm:$0xff]
  %v7028 = vld [vmem:[%s6993 + $0x110] sm:$0xff]
  %v7029 = vld [vmem:[%s6993 + $0x118] sm:$0xff]
  %v7030 = vld [vmem:[%s6993 + $0x120] sm:$0xff]
  %v7031 = vld [vmem:[%s6993 + $0x128] sm:$0xff]
  %v7032 = vld [vmem:[%s6993 + $0x130] sm:$0xff]
  %v7033 = vld [vmem:[%s6993 + $0x138] sm:$0xff]
  %v7034 = vld [vmem:[%s6993 + $0x140] sm:$0xff]
  %v7035 = vld [vmem:[%s6993 + $0x148] sm:$0xff]
  %v7036 = vld [vmem:[%s6993 + $0x150] sm:$0xff]
  %v7037 = vld [vmem:[%s6993 + $0x158] sm:$0xff]
  %v7038 = vld [vmem:[%s6993 + $0x160] sm:$0xff]
  %v7039 = vld [vmem:[%s6993 + $0x168] sm:$0xff]
  %v7040 = vld [vmem:[%s6993 + $0x170] sm:$0xff]
  %v7041 = vld [vmem:[%s6993 + $0x178] sm:$0xff]
  %v7042 = vld [vmem:[%s6993 + $0x180] sm:$0xff]
  %v7043 = vld [vmem:[%s6993 + $0x188] sm:$0xff]
  %v7044 = vld [vmem:[%s6993 + $0x190] sm:$0xff]
  %v7045 = vld [vmem:[%s6993 + $0x198] sm:$0xff]
  %v7046 = vld [vmem:[%s6993 + $0x1a0] sm:$0xff]
  %v7047 = vld [vmem:[%s6993 + $0x1a8] sm:$0xff]
  %v7048 = vld [vmem:[%s6993 + $0x1b0] sm:$0xff]
  %v7049 = vld [vmem:[%s6993 + $0x1b8] sm:$0xff]
  %v7050 = vld [vmem:[%s6993 + $0x1c0] sm:$0xff]
  %v7051 = vld [vmem:[%s6993 + $0x1c8] sm:$0xff]
  %v7052 = vld [vmem:[%s6993 + $0x1d0] sm:$0xff]
  %v7053 = vld [vmem:[%s6993 + $0x1d8] sm:$0xff]
  %v7054 = vld [vmem:[%s6993 + $0x1e0] sm:$0xff]
  %v7055 = vld [vmem:[%s6993 + $0x1e8] sm:$0xff]
  %v7056 = vld [vmem:[%s6993 + $0x1f0] sm:$0xff]
  %v7057 = vld [vmem:[%s6993 + $0x1f8] sm:$0xff]
  %v7058 = vld [vmem:[%s6993 + $0x200] sm:$0xff]
  %v7059 = vld [vmem:[%s6993 + $0x208] sm:$0xff]
  %v7060 = vld [vmem:[%s6993 + $0x210] sm:$0xff]
  %v7061 = vld [vmem:[%s6993 + $0x218] sm:$0xff]
  %v7062 = vld [vmem:[%s6993 + $0x220] sm:$0xff]
  %v7063 = vld [vmem:[%s6993 + $0x228] sm:$0xff]
  %v7064 = vld [vmem:[%s6993 + $0x230] sm:$0xff]
  %v7065 = vld [vmem:[%s6993 + $0x238] sm:$0xff]
  %v7066 = vld [vmem:[%s6993 + $0x240] sm:$0xff]
  %v7067 = vld [vmem:[%s6993 + $0x248] sm:$0xff]
  %v7068 = vld [vmem:[%s6993 + $0x250] sm:$0xff]
  %v7069 = vld [vmem:[%s6993 + $0x258] sm:$0xff]
  %v7070 = vld [vmem:[%s6993 + $0x260] sm:$0xff]
  %v7071 = vld [vmem:[%s6993 + $0x268] sm:$0xff]
  %v7072 = vld [vmem:[%s6993 + $0x270] sm:$0xff]
  %v7073 = vld [vmem:[%s6993 + $0x278] sm:$0xff]
  %v7074 = vld [vmem:[%s6993 + $0x280] sm:$0xff]
  %v7075 = vld [vmem:[%s6993 + $0x288] sm:$0xff]
  %v7076 = vld [vmem:[%s6993 + $0x290] sm:$0xff]
  %v7077 = vld [vmem:[%s6993 + $0x298] sm:$0xff]
  %v7078 = vld [vmem:[%s6993 + $0x2a0] sm:$0xff]
  %v7079 = vld [vmem:[%s6993 + $0x2a8] sm:$0xff]
  %v7080 = vld [vmem:[%s6993 + $0x2b0] sm:$0xff]
  %v7081 = vld [vmem:[%s6993 + $0x2b8] sm:$0xff]
  %v7082 = vld [vmem:[%s6993 + $0x2c0] sm:$0xff]
  %v7083 = vld [vmem:[%s6993 + $0x2c8] sm:$0xff]
  %v7084 = vld [vmem:[%s6993 + $0x2d0] sm:$0xff]
  %v7085 = vld [vmem:[%s6993 + $0x2d8] sm:$0xff]
  %v7086 = vld [vmem:[%s6993 + $0x2e0] sm:$0xff]
  %v7087 = vld [vmem:[%s6993 + $0x2e8] sm:$0xff]
  %v7088 = vld [vmem:[%s6993 + $0x2f0] sm:$0xff]
  %v7089 = vld [vmem:[%s6993 + $0x2f8] sm:$0xff]
  %v7090 = vld [vmem:[%s6993 + $0x300] sm:$0xff]
  %v7091 = vld [vmem:[%s6993 + $0x308] sm:$0xff]
  %v7092 = vld [vmem:[%s6993 + $0x310] sm:$0xff]
  %v7093 = vld [vmem:[%s6993 + $0x318] sm:$0xff]
  %v7094 = vld [vmem:[%s6993 + $0x320] sm:$0xff]
  %v7095 = vld [vmem:[%s6993 + $0x328] sm:$0xff]
  %v7096 = vld [vmem:[%s6993 + $0x330] sm:$0xff]
  %v7097 = vld [vmem:[%s6993 + $0x338] sm:$0xff]
  %v7098 = vld [vmem:[%s6993 + $0x340] sm:$0xff]
  %v7099 = vld [vmem:[%s6993 + $0x348] sm:$0xff]
  %v7100 = vld [vmem:[%s6993 + $0x350] sm:$0xff]
  %v7101 = vld [vmem:[%s6993 + $0x358] sm:$0xff]
  %v7103 = vsel %vm88, %v6996, 0
  %v7106 = vsel %vm88, %v6999, 0
  %v7109 = vsel %vm88, %v7002, 0
  %v7112 = vsel %vm88, %v7005, 0
  %v7115 = vsel %vm88, %v7008, 0
  %v7118 = vsel %vm88, %v7011, 0
  %v7121 = vsel %vm88, %v7014, 0
  %v7124 = vsel %vm88, %v7017, 0
  %v7127 = vsel %vm88, %v7020, 0
  %v7130 = vsel %vm88, %v7023, 0
  %v7133 = vsel %vm88, %v7026, 0
  %v7136 = vsel %vm88, %v7029, 0
  %v7139 = vsel %vm88, %v7032, 0
  %v7142 = vsel %vm88, %v7035, 0
  %v7145 = vsel %vm88, %v7038, 0
  %v7148 = vsel %vm88, %v7041, 0
  %v7151 = vsel %vm88, %v7044, 0
  %v7154 = vsel %vm88, %v7047, 0
  %v7157 = vsel %vm88, %v7050, 0
  %v7160 = vsel %vm88, %v7053, 0
  %v7163 = vsel %vm88, %v7056, 0
  %v7166 = vsel %vm88, %v7059, 0
  %v7169 = vsel %vm88, %v7062, 0
  %v7172 = vsel %vm88, %v7065, 0
  %v7175 = vsel %vm88, %v7068, 0
  %v7178 = vsel %vm88, %v7071, 0
  %v7181 = vsel %vm88, %v7074, 0
  %v7184 = vsel %vm88, %v7077, 0
  %v7187 = vsel %vm88, %v7080, 0
  %v7190 = vsel %vm88, %v7083, 0
  %v7193 = vsel %vm88, %v7086, 0
  %v7196 = vsel %vm88, %v7089, 0
  %v7199 = vsel %vm88, %v7092, 0
  %v7202 = vsel %vm88, %v7095, 0
  %v7205 = vsel %vm88, %v7098, 0
  %v7208 = vsel %vm88, %v7101, 0
  %7210 = vmatprep.subr.mxu0 0.0
  %7211 = vmatpush1.msra.mxu0 %v457
  %7212 = vmatprep.subr.mxu0 0.0
  %7213 = vmatpush1.msra.mxu0 %v456
  %7214 = vmatprep.subr.mxu0 0.0
  %7215 = vmatpush1.msra.mxu0 %v455
  %7216 = vmatprep.subr.mxu0 0.0
  %7217 = vmatpush1.msra.mxu0 %v454
  %7218 = vmatprep.subr.mxu0 0.0
  %7219 = vmatpush1.msra.mxu0 %v453
  %7220 = vmatprep.subr.mxu0 0.0
  %7221 = vmatpush1.msra.mxu0 %v452
  %7222 = vmatprep.subr.mxu0 0.0
  %7223 = vmatpush1.msra.mxu0 %v451
  %7224 = vmatprep.subr.mxu0 0.0
  %7225 = vmatpush1.msra.mxu0 %v450
  %7226 = vmatprep.subr.mxu0 0.0
  %7227 = vmatpush1.msra.mxu0 %v449
  %7228 = vmatprep.subr.mxu0 0.0
  %7229 = vmatpush1.msra.mxu0 %v448
  %7230 = vmatprep.subr.mxu0 0.0
  %7231 = vmatpush1.msra.mxu0 %v447
  %7232 = vmatprep.subr.mxu0 0.0
  %7233 = vmatpush1.msra.mxu0 %v446
  %7234 = vmatprep.subr.mxu0 0.0
  %7235 = vmatpush1.msra.mxu0 %v445
  %7236 = vmatprep.subr.mxu0 0.0
  %7237 = vmatpush1.msra.mxu0 %v444
  %7238 = vmatprep.subr.mxu0 0.0
  %7239 = vmatpush1.msra.mxu0 %v443
  %7240 = vmatprep.subr.mxu0 0.0
  %7241 = vmatpush1.msra.mxu0 %v442
  %7242 = vmatprep.subr.mxu0 0.0
  %7243 = vmatpush2.msra.mxu0 %v473
  %7244 = vmatprep.subr.mxu0 0.0
  %7245 = vmatpush2.msra.mxu0 %v472
  %7246 = vmatprep.subr.mxu0 0.0
  %7247 = vmatpush2.msra.mxu0 %v471
  %7248 = vmatprep.subr.mxu0 0.0
  %7249 = vmatpush2.msra.mxu0 %v470
  %7250 = vmatprep.subr.mxu0 0.0
  %7251 = vmatpush2.msra.mxu0 %v469
  %7252 = vmatprep.subr.mxu0 0.0
  %7253 = vmatpush2.msra.mxu0 %v468
  %7254 = vmatprep.subr.mxu0 0.0
  %7255 = vmatpush2.msra.mxu0 %v467
  %7256 = vmatprep.subr.mxu0 0.0
  %7257 = vmatpush2.msra.mxu0 %v466
  %7258 = vmatprep.subr.mxu0 0.0
  %7259 = vmatpush2.msra.mxu0 %v465
  %7260 = vmatprep.subr.mxu0 0.0
  %7261 = vmatpush2.msra.mxu0 %v464
  %7262 = vmatprep.subr.mxu0 0.0
  %7263 = vmatpush2.msra.mxu0 %v463
  %7264 = vmatprep.subr.mxu0 0.0
  %7265 = vmatpush2.msra.mxu0 %v462
  %7266 = vmatprep.subr.mxu0 0.0
  %7267 = vmatpush2.msra.mxu0 %v461
  %7268 = vmatprep.subr.mxu0 0.0
  %7269 = vmatpush2.msra.mxu0 %v460
  %7270 = vmatprep.subr.mxu0 0.0
  %7271 = vmatpush2.msra.mxu0 %v459
  %7272 = vmatprep.subr.mxu0 0.0
  %7273 = vmatpush2.msra.mxu0 %v458
  %7274 = vmatprep.mubr.f32.mxu0 %v6995
  %7275 = vmatmul.mubr.f32.gmra.mxu0 %v6994
  %v7276 = vpop.f32.mrf.mxu0
  %v7277 = vadd.f32 0.0, %v7276
  %v7278 = vpop.f32.mrf.mxu0
  %7279 = vmatprep.mubr.f32.mxu0 %v6998
  %7280 = vmatmul.mubr.f32.gmra.mxu0 %v6997
  %v7281 = vpop.f32.mrf.mxu0
  %v7282 = vadd.f32 0.0, %v7281
  %v7283 = vpop.f32.mrf.mxu0
  %7284 = vmatprep.mubr.f32.mxu0 %v7001
  %7285 = vmatmul.mubr.f32.gmra.mxu0 %v7000
  %v7286 = vpop.f32.mrf.mxu0
  %v7287 = vadd.f32 0.0, %v7286
  %v7288 = vpop.f32.mrf.mxu0
  %7289 = vmatprep.mubr.f32.mxu0 %v7004
  %7290 = vmatmul.mubr.f32.gmra.mxu0 %v7003
  %v7291 = vpop.f32.mrf.mxu0
  %v7292 = vadd.f32 0.0, %v7291
  %v7293 = vpop.f32.mrf.mxu0
  %7294 = vmatprep.mubr.f32.mxu0 %v7007
  %7295 = vmatmul.mubr.f32.gmra.mxu0 %v7006
  %v7296 = vpop.f32.mrf.mxu0
  %v7297 = vadd.f32 0.0, %v7296
  %v7298 = vpop.f32.mrf.mxu0
  %7299 = vmatprep.mubr.f32.mxu0 %v7010
  %7300 = vmatmul.mubr.f32.gmra.mxu0 %v7009
  %v7301 = vpop.f32.mrf.mxu0
  %v7302 = vadd.f32 0.0, %v7301
  %v7303 = vpop.f32.mrf.mxu0
  %7304 = vmatprep.mubr.f32.mxu0 %v7013
  %7305 = vmatmul.mubr.f32.gmra.mxu0 %v7012
  %v7306 = vpop.f32.mrf.mxu0
  %v7307 = vadd.f32 0.0, %v7306
  %v7308 = vpop.f32.mrf.mxu0
  %7309 = vmatprep.mubr.f32.mxu0 %v7016
  %7310 = vmatmul.mubr.f32.gmra.mxu0 %v7015
  %v7311 = vpop.f32.mrf.mxu0
  %v7312 = vadd.f32 0.0, %v7311
  %v7313 = vpop.f32.mrf.mxu0
  %7314 = vmatprep.mubr.f32.mxu0 %v7019
  %7315 = vmatmul.mubr.f32.gmra.mxu0 %v7018
  %v7316 = vpop.f32.mrf.mxu0
  %v7317 = vadd.f32 0.0, %v7316
  %v7318 = vpop.f32.mrf.mxu0
  %7319 = vmatprep.mubr.f32.mxu0 %v7022
  %7320 = vmatmul.mubr.f32.gmra.mxu0 %v7021
  %v7321 = vpop.f32.mrf.mxu0
  %v7322 = vadd.f32 0.0, %v7321
  %v7323 = vpop.f32.mrf.mxu0
  %7324 = vmatprep.mubr.f32.mxu0 %v7025
  %7325 = vmatmul.mubr.f32.gmra.mxu0 %v7024
  %v7326 = vpop.f32.mrf.mxu0
  %v7327 = vadd.f32 0.0, %v7326
  %v7328 = vpop.f32.mrf.mxu0
  %7329 = vmatprep.mubr.f32.mxu0 %v7028
  %7330 = vmatmul.mubr.f32.gmra.mxu0 %v7027
  %v7331 = vpop.f32.mrf.mxu0
  %v7332 = vadd.f32 0.0, %v7331
  %v7333 = vpop.f32.mrf.mxu0
  %7334 = vmatprep.mubr.f32.mxu0 %v7031
  %7335 = vmatmul.mubr.f32.gmra.mxu0 %v7030
  %v7336 = vpop.f32.mrf.mxu0
  %v7337 = vadd.f32 0.0, %v7336
  %v7338 = vpop.f32.mrf.mxu0
  %7339 = vmatprep.mubr.f32.mxu0 %v7034
  %7340 = vmatmul.mubr.f32.gmra.mxu0 %v7033
  %v7341 = vpop.f32.mrf.mxu0
  %v7342 = vadd.f32 0.0, %v7341
  %v7343 = vpop.f32.mrf.mxu0
  %7344 = vmatprep.mubr.f32.mxu0 %v7037
  %7345 = vmatmul.mubr.f32.gmra.mxu0 %v7036
  %v7346 = vpop.f32.mrf.mxu0
  %v7347 = vadd.f32 0.0, %v7346
  %v7348 = vpop.f32.mrf.mxu0
  %7349 = vmatprep.mubr.f32.mxu0 %v7040
  %7350 = vmatmul.mubr.f32.gmra.mxu0 %v7039
  %v7351 = vpop.f32.mrf.mxu0
  %v7352 = vadd.f32 0.0, %v7351
  %v7353 = vpop.f32.mrf.mxu0
  %7354 = vmatprep.mubr.f32.mxu0 %v7043
  %7355 = vmatmul.mubr.f32.gmra.mxu0 %v7042
  %v7356 = vpop.f32.mrf.mxu0
  %v7357 = vadd.f32 0.0, %v7356
  %v7358 = vpop.f32.mrf.mxu0
  %7359 = vmatprep.mubr.f32.mxu0 %v7046
  %7360 = vmatmul.mubr.f32.gmra.mxu0 %v7045
  %v7361 = vpop.f32.mrf.mxu0
  %v7362 = vadd.f32 0.0, %v7361
  %v7363 = vpop.f32.mrf.mxu0
  %7364 = vmatprep.mubr.f32.mxu0 %v7049
  %7365 = vmatmul.mubr.f32.gmra.mxu0 %v7048
  %v7366 = vpop.f32.mrf.mxu0
  %v7367 = vadd.f32 0.0, %v7366
  %v7368 = vpop.f32.mrf.mxu0
  %7369 = vmatprep.mubr.f32.mxu0 %v7052
  %7370 = vmatmul.mubr.f32.gmra.mxu0 %v7051
  %v7371 = vpop.f32.mrf.mxu0
  %v7372 = vadd.f32 0.0, %v7371
  %v7373 = vpop.f32.mrf.mxu0
  %7374 = vmatprep.mubr.f32.mxu0 %v7055
  %7375 = vmatmul.mubr.f32.gmra.mxu0 %v7054
  %v7376 = vpop.f32.mrf.mxu0
  %v7377 = vadd.f32 0.0, %v7376
  %v7378 = vpop.f32.mrf.mxu0
  %7379 = vmatprep.mubr.f32.mxu0 %v7058
  %7380 = vmatmul.mubr.f32.gmra.mxu0 %v7057
  %v7381 = vpop.f32.mrf.mxu0
  %v7382 = vadd.f32 0.0, %v7381
  %v7383 = vpop.f32.mrf.mxu0
  %7384 = vmatprep.mubr.f32.mxu0 %v7061
  %7385 = vmatmul.mubr.f32.gmra.mxu0 %v7060
  %v7386 = vpop.f32.mrf.mxu0
  %v7387 = vadd.f32 0.0, %v7386
  %v7388 = vpop.f32.mrf.mxu0
  %7389 = vmatprep.mubr.f32.mxu0 %v7064
  %7390 = vmatmul.mubr.f32.gmra.mxu0 %v7063
  %v7391 = vpop.f32.mrf.mxu0
  %v7392 = vadd.f32 0.0, %v7391
  %v7393 = vpop.f32.mrf.mxu0
  %7394 = vmatprep.mubr.f32.mxu0 %v7067
  %7395 = vmatmul.mubr.f32.gmra.mxu0 %v7066
  %v7396 = vpop.f32.mrf.mxu0
  %v7397 = vadd.f32 0.0, %v7396
  %v7398 = vpop.f32.mrf.mxu0
  %7399 = vmatprep.mubr.f32.mxu0 %v7070
  %7400 = vmatmul.mubr.f32.gmra.mxu0 %v7069
  %v7401 = vpop.f32.mrf.mxu0
  %v7402 = vadd.f32 0.0, %v7401
  %v7403 = vpop.f32.mrf.mxu0
  %7404 = vmatprep.mubr.f32.mxu0 %v7073
  %7405 = vmatmul.mubr.f32.gmra.mxu0 %v7072
  %v7406 = vpop.f32.mrf.mxu0
  %v7407 = vadd.f32 0.0, %v7406
  %v7408 = vpop.f32.mrf.mxu0
  %7409 = vmatprep.mubr.f32.mxu0 %v7076
  %7410 = vmatmul.mubr.f32.gmra.mxu0 %v7075
  %v7411 = vpop.f32.mrf.mxu0
  %v7412 = vadd.f32 0.0, %v7411
  %v7413 = vpop.f32.mrf.mxu0
  %7414 = vmatprep.mubr.f32.mxu0 %v7079
  %7415 = vmatmul.mubr.f32.gmra.mxu0 %v7078
  %v7416 = vpop.f32.mrf.mxu0
  %v7417 = vadd.f32 0.0, %v7416
  %v7418 = vpop.f32.mrf.mxu0
  %7419 = vmatprep.mubr.f32.mxu0 %v7082
  %7420 = vmatmul.mubr.f32.gmra.mxu0 %v7081
  %v7421 = vpop.f32.mrf.mxu0
  %v7422 = vadd.f32 0.0, %v7421
  %v7423 = vpop.f32.mrf.mxu0
  %7424 = vmatprep.mubr.f32.mxu0 %v7085
  %7425 = vmatmul.mubr.f32.gmra.mxu0 %v7084
  %v7426 = vpop.f32.mrf.mxu0
  %v7427 = vadd.f32 0.0, %v7426
  %v7428 = vpop.f32.mrf.mxu0
  %7429 = vmatprep.mubr.f32.mxu0 %v7088
  %7430 = vmatmul.mubr.f32.gmra.mxu0 %v7087
  %v7431 = vpop.f32.mrf.mxu0
  %v7432 = vadd.f32 0.0, %v7431
  %v7433 = vpop.f32.mrf.mxu0
  %7434 = vmatprep.mubr.f32.mxu0 %v7091
  %7435 = vmatmul.mubr.f32.gmra.mxu0 %v7090
  %v7436 = vpop.f32.mrf.mxu0
  %v7437 = vadd.f32 0.0, %v7436
  %v7438 = vpop.f32.mrf.mxu0
  %7439 = vmatprep.mubr.f32.mxu0 %v7094
  %7440 = vmatmul.mubr.f32.gmra.mxu0 %v7093
  %v7441 = vpop.f32.mrf.mxu0
  %v7442 = vadd.f32 0.0, %v7441
  %v7443 = vpop.f32.mrf.mxu0
  %7444 = vmatprep.mubr.f32.mxu0 %v7097
  %7445 = vmatmul.mubr.f32.gmra.mxu0 %v7096
  %v7446 = vpop.f32.mrf.mxu0
  %v7447 = vadd.f32 0.0, %v7446
  %v7448 = vpop.f32.mrf.mxu0
  %7449 = vmatprep.mubr.f32.mxu0 %v7100
  %7450 = vmatmul.mubr.f32.gmra.mxu0 %v7099
  %v7451 = vpop.f32.mrf.mxu0
  %v7452 = vadd.f32 0.0, %v7451
  %v7453 = vpop.f32.mrf.mxu0
  %7454 = vdwg.mxu0
  %7455 = vmatprep.subr.mxu0 0.0
  %7456 = vmatpush1.msra.mxu0 0.0
  %7457 = vmatprep.subr.mxu0 0.0
  %7458 = vmatpush1.msra.mxu0 0.0
  %7459 = vmatprep.subr.mxu0 0.0
  %7460 = vmatpush1.msra.mxu0 0.0
  %7461 = vmatprep.subr.mxu0 0.0
  %7462 = vmatpush1.msra.mxu0 0.0
  %7463 = vmatprep.subr.mxu0 0.0
  %7464 = vmatpush1.msra.mxu0 0.0
  %7465 = vmatprep.subr.mxu0 0.0
  %7466 = vmatpush1.msra.mxu0 0.0
  %7467 = vmatprep.subr.mxu0 0.0
  %7468 = vmatpush1.msra.mxu0 0.0
  %7469 = vmatprep.subr.mxu0 0.0
  %7470 = vmatpush1.msra.mxu0 0.0
  %7471 = vmatprep.subr.mxu0 0.0
  %7472 = vmatpush1.msra.mxu0 0.0
  %7473 = vmatprep.subr.mxu0 0.0
  %7474 = vmatpush1.msra.mxu0 0.0
  %7475 = vmatprep.subr.mxu0 0.0
  %7476 = vmatpush1.msra.mxu0 0.0
  %7477 = vmatprep.subr.mxu0 0.0
  %7478 = vmatpush1.msra.mxu0 0.0
  %7479 = vmatprep.subr.mxu0 0.0
  %7480 = vmatpush1.msra.mxu0 %v477
  %7481 = vmatprep.subr.mxu0 0.0
  %7482 = vmatpush1.msra.mxu0 %v476
  %7483 = vmatprep.subr.mxu0 0.0
  %7484 = vmatpush1.msra.mxu0 %v475
  %7485 = vmatprep.subr.mxu0 0.0
  %7486 = vmatpush1.msra.mxu0 %v474
  %7487 = vmatprep.subr.mxu0 0.0
  %7488 = vmatpush2.msra.mxu0 0.0
  %7489 = vmatprep.subr.mxu0 0.0
  %7490 = vmatpush2.msra.mxu0 0.0
  %7491 = vmatprep.subr.mxu0 0.0
  %7492 = vmatpush2.msra.mxu0 0.0
  %7493 = vmatprep.subr.mxu0 0.0
  %7494 = vmatpush2.msra.mxu0 0.0
  %7495 = vmatprep.subr.mxu0 0.0
  %7496 = vmatpush2.msra.mxu0 0.0
  %7497 = vmatprep.subr.mxu0 0.0
  %7498 = vmatpush2.msra.mxu0 0.0
  %7499 = vmatprep.subr.mxu0 0.0
  %7500 = vmatpush2.msra.mxu0 0.0
  %7501 = vmatprep.subr.mxu0 0.0
  %7502 = vmatpush2.msra.mxu0 0.0
  %7503 = vmatprep.subr.mxu0 0.0
  %7504 = vmatpush2.msra.mxu0 0.0
  %7505 = vmatprep.subr.mxu0 0.0
  %7506 = vmatpush2.msra.mxu0 0.0
  %7507 = vmatprep.subr.mxu0 0.0
  %7508 = vmatpush2.msra.mxu0 0.0
  %7509 = vmatprep.subr.mxu0 0.0
  %7510 = vmatpush2.msra.mxu0 0.0
  %7511 = vmatprep.subr.mxu0 0.0
  %7512 = vmatpush2.msra.mxu0 0.0
  %7513 = vmatprep.subr.mxu0 0.0
  %7514 = vmatpush2.msra.mxu0 0.0
  %7515 = vmatprep.subr.mxu0 0.0
  %7516 = vmatpush2.msra.mxu0 0.0
  %7517 = vmatprep.subr.mxu0 0.0
  %7518 = vmatpush2.msra.mxu0 0.0
  %7519 = vmatprep.mubr.f32.mxu0 0.0
  %7520 = vmatmul.mubr.f32.gmra.mxu0 %v7103
  %v7521 = vpop.f32.mrf.mxu0
  %v7522 = vadd.f32 %v7277, %v7521
  %v7523 = vpop.f32.mrf.mxu0
  %7524 = vmatprep.mubr.f32.mxu0 0.0
  %7525 = vmatmul.mubr.f32.gmra.mxu0 %v7106
  %v7526 = vpop.f32.mrf.mxu0
  %v7527 = vadd.f32 %v7282, %v7526
  %v7528 = vpop.f32.mrf.mxu0
  %7529 = vmatprep.mubr.f32.mxu0 0.0
  %7530 = vmatmul.mubr.f32.gmra.mxu0 %v7109
  %v7531 = vpop.f32.mrf.mxu0
  %v7532 = vadd.f32 %v7287, %v7531
  %v7533 = vpop.f32.mrf.mxu0
  %7534 = vmatprep.mubr.f32.mxu0 0.0
  %7535 = vmatmul.mubr.f32.gmra.mxu0 %v7112
  %v7536 = vpop.f32.mrf.mxu0
  %v7537 = vadd.f32 %v7292, %v7536
  %v7538 = vpop.f32.mrf.mxu0
  %7539 = vmatprep.mubr.f32.mxu0 0.0
  %7540 = vmatmul.mubr.f32.gmra.mxu0 %v7115
  %v7541 = vpop.f32.mrf.mxu0
  %v7542 = vadd.f32 %v7297, %v7541
  %v7543 = vpop.f32.mrf.mxu0
  %7544 = vmatprep.mubr.f32.mxu0 0.0
  %7545 = vmatmul.mubr.f32.gmra.mxu0 %v7118
  %v7546 = vpop.f32.mrf.mxu0
  %v7547 = vadd.f32 %v7302, %v7546
  %v7548 = vpop.f32.mrf.mxu0
  %7549 = vmatprep.mubr.f32.mxu0 0.0
  %7550 = vmatmul.mubr.f32.gmra.mxu0 %v7121
  %v7551 = vpop.f32.mrf.mxu0
  %v7552 = vadd.f32 %v7307, %v7551
  %v7553 = vpop.f32.mrf.mxu0
  %7554 = vmatprep.mubr.f32.mxu0 0.0
  %7555 = vmatmul.mubr.f32.gmra.mxu0 %v7124
  %v7556 = vpop.f32.mrf.mxu0
  %v7557 = vadd.f32 %v7312, %v7556
  %v7558 = vpop.f32.mrf.mxu0
  %7559 = vmatprep.mubr.f32.mxu0 0.0
  %7560 = vmatmul.mubr.f32.gmra.mxu0 %v7127
  %v7561 = vpop.f32.mrf.mxu0
  %v7562 = vadd.f32 %v7317, %v7561
  %v7563 = vpop.f32.mrf.mxu0
  %7564 = vmatprep.mubr.f32.mxu0 0.0
  %7565 = vmatmul.mubr.f32.gmra.mxu0 %v7130
  %v7566 = vpop.f32.mrf.mxu0
  %v7567 = vadd.f32 %v7322, %v7566
  %v7568 = vpop.f32.mrf.mxu0
  %7569 = vmatprep.mubr.f32.mxu0 0.0
  %7570 = vmatmul.mubr.f32.gmra.mxu0 %v7133
  %v7571 = vpop.f32.mrf.mxu0
  %v7572 = vadd.f32 %v7327, %v7571
  %v7573 = vpop.f32.mrf.mxu0
  %7574 = vmatprep.mubr.f32.mxu0 0.0
  %7575 = vmatmul.mubr.f32.gmra.mxu0 %v7136
  %v7576 = vpop.f32.mrf.mxu0
  %v7577 = vadd.f32 %v7332, %v7576
  %v7578 = vpop.f32.mrf.mxu0
  %7579 = vmatprep.mubr.f32.mxu0 0.0
  %7580 = vmatmul.mubr.f32.gmra.mxu0 %v7139
  %v7581 = vpop.f32.mrf.mxu0
  %v7582 = vadd.f32 %v7337, %v7581
  %v7583 = vpop.f32.mrf.mxu0
  %7584 = vmatprep.mubr.f32.mxu0 0.0
  %7585 = vmatmul.mubr.f32.gmra.mxu0 %v7142
  %v7586 = vpop.f32.mrf.mxu0
  %v7587 = vadd.f32 %v7342, %v7586
  %v7588 = vpop.f32.mrf.mxu0
  %7589 = vmatprep.mubr.f32.mxu0 0.0
  %7590 = vmatmul.mubr.f32.gmra.mxu0 %v7145
  %v7591 = vpop.f32.mrf.mxu0
  %v7592 = vadd.f32 %v7347, %v7591
  %v7593 = vpop.f32.mrf.mxu0
  %7594 = vmatprep.mubr.f32.mxu0 0.0
  %7595 = vmatmul.mubr.f32.gmra.mxu0 %v7148
  %v7596 = vpop.f32.mrf.mxu0
  %v7597 = vadd.f32 %v7352, %v7596
  %v7598 = vpop.f32.mrf.mxu0
  %7599 = vmatprep.mubr.f32.mxu0 0.0
  %7600 = vmatmul.mubr.f32.gmra.mxu0 %v7151
  %v7601 = vpop.f32.mrf.mxu0
  %v7602 = vadd.f32 %v7357, %v7601
  %v7603 = vpop.f32.mrf.mxu0
  %7604 = vmatprep.mubr.f32.mxu0 0.0
  %7605 = vmatmul.mubr.f32.gmra.mxu0 %v7154
  %v7606 = vpop.f32.mrf.mxu0
  %v7607 = vadd.f32 %v7362, %v7606
  %v7608 = vpop.f32.mrf.mxu0
  %7609 = vmatprep.mubr.f32.mxu0 0.0
  %7610 = vmatmul.mubr.f32.gmra.mxu0 %v7157
  %v7611 = vpop.f32.mrf.mxu0
  %v7612 = vadd.f32 %v7367, %v7611
  %v7613 = vpop.f32.mrf.mxu0
  %7614 = vmatprep.mubr.f32.mxu0 0.0
  %7615 = vmatmul.mubr.f32.gmra.mxu0 %v7160
  %v7616 = vpop.f32.mrf.mxu0
  %v7617 = vadd.f32 %v7372, %v7616
  %v7618 = vpop.f32.mrf.mxu0
  %7619 = vmatprep.mubr.f32.mxu0 0.0
  %7620 = vmatmul.mubr.f32.gmra.mxu0 %v7163
  %v7621 = vpop.f32.mrf.mxu0
  %v7622 = vadd.f32 %v7377, %v7621
  %v7623 = vpop.f32.mrf.mxu0
  %7624 = vmatprep.mubr.f32.mxu0 0.0
  %7625 = vmatmul.mubr.f32.gmra.mxu0 %v7166
  %v7626 = vpop.f32.mrf.mxu0
  %v7627 = vadd.f32 %v7382, %v7626
  %v7628 = vpop.f32.mrf.mxu0
  %7629 = vmatprep.mubr.f32.mxu0 0.0
  %7630 = vmatmul.mubr.f32.gmra.mxu0 %v7169
  %v7631 = vpop.f32.mrf.mxu0
  %v7632 = vadd.f32 %v7387, %v7631
  %v7633 = vpop.f32.mrf.mxu0
  %7634 = vmatprep.mubr.f32.mxu0 0.0
  %7635 = vmatmul.mubr.f32.gmra.mxu0 %v7172
  %v7636 = vpop.f32.mrf.mxu0
  %v7637 = vadd.f32 %v7392, %v7636
  %v7638 = vpop.f32.mrf.mxu0
  %7639 = vmatprep.mubr.f32.mxu0 0.0
  %7640 = vmatmul.mubr.f32.gmra.mxu0 %v7175
  %v7641 = vpop.f32.mrf.mxu0
  %v7642 = vadd.f32 %v7397, %v7641
  %v7643 = vpop.f32.mrf.mxu0
  %7644 = vmatprep.mubr.f32.mxu0 0.0
  %7645 = vmatmul.mubr.f32.gmra.mxu0 %v7178
  %v7646 = vpop.f32.mrf.mxu0
  %v7647 = vadd.f32 %v7402, %v7646
  %v7648 = vpop.f32.mrf.mxu0
  %7649 = vmatprep.mubr.f32.mxu0 0.0
  %7650 = vmatmul.mubr.f32.gmra.mxu0 %v7181
  %v7651 = vpop.f32.mrf.mxu0
  %v7652 = vadd.f32 %v7407, %v7651
  %v7653 = vpop.f32.mrf.mxu0
  %7654 = vmatprep.mubr.f32.mxu0 0.0
  %7655 = vmatmul.mubr.f32.gmra.mxu0 %v7184
  %v7656 = vpop.f32.mrf.mxu0
  %v7657 = vadd.f32 %v7412, %v7656
  %v7658 = vpop.f32.mrf.mxu0
  %7659 = vmatprep.mubr.f32.mxu0 0.0
  %7660 = vmatmul.mubr.f32.gmra.mxu0 %v7187
  %v7661 = vpop.f32.mrf.mxu0
  %v7662 = vadd.f32 %v7417, %v7661
  %v7663 = vpop.f32.mrf.mxu0
  %7664 = vmatprep.mubr.f32.mxu0 0.0
  %7665 = vmatmul.mubr.f32.gmra.mxu0 %v7190
  %v7666 = vpop.f32.mrf.mxu0
  %v7667 = vadd.f32 %v7422, %v7666
  %v7668 = vpop.f32.mrf.mxu0
  %7669 = vmatprep.mubr.f32.mxu0 0.0
  %7670 = vmatmul.mubr.f32.gmra.mxu0 %v7193
  %v7671 = vpop.f32.mrf.mxu0
  %v7672 = vadd.f32 %v7427, %v7671
  %v7673 = vpop.f32.mrf.mxu0
  %7674 = vmatprep.mubr.f32.mxu0 0.0
  %7675 = vmatmul.mubr.f32.gmra.mxu0 %v7196
  %v7676 = vpop.f32.mrf.mxu0
  %v7677 = vadd.f32 %v7432, %v7676
  %v7678 = vpop.f32.mrf.mxu0
  %7679 = vmatprep.mubr.f32.mxu0 0.0
  %7680 = vmatmul.mubr.f32.gmra.mxu0 %v7199
  %v7681 = vpop.f32.mrf.mxu0
  %v7682 = vadd.f32 %v7437, %v7681
  %v7683 = vpop.f32.mrf.mxu0
  %7684 = vmatprep.mubr.f32.mxu0 0.0
  %7685 = vmatmul.mubr.f32.gmra.mxu0 %v7202
  %v7686 = vpop.f32.mrf.mxu0
  %v7687 = vadd.f32 %v7442, %v7686
  %v7688 = vpop.f32.mrf.mxu0
  %7689 = vmatprep.mubr.f32.mxu0 0.0
  %7690 = vmatmul.mubr.f32.gmra.mxu0 %v7205
  %v7691 = vpop.f32.mrf.mxu0
  %v7692 = vadd.f32 %v7447, %v7691
  %v7693 = vpop.f32.mrf.mxu0
  %7694 = vmatprep.mubr.f32.mxu0 0.0
  %7695 = vmatmul.mubr.f32.gmra.mxu0 %v7208
  %v7696 = vpop.f32.mrf.mxu0
  %v7697 = vadd.f32 %v7452, %v7696
  %v7698 = vpop.f32.mrf.mxu0
  %7699 = vdwg.mxu0
  %s7700 = scalar_lea.vmem %s4, 48
  %v7701 = vld [vmem:[%s7700] sm:$0xff]
  %v7703 = vsel %vm1894, %v7522, 0
  %v7706 = vsel %vm1894, %v7527, 0
  %v7709 = vsel %vm1894, %v7532, 0
  %v7712 = vsel %vm1894, %v7537, 0
  %v7715 = vsel %vm1894, %v7542, 0
  %v7718 = vsel %vm1894, %v7547, 0
  %v7721 = vsel %vm1894, %v7552, 0
  %v7724 = vsel %vm1894, %v7557, 0
  %v7727 = vsel %vm1894, %v7562, 0
  %v7730 = vsel %vm1894, %v7567, 0
  %v7733 = vsel %vm1894, %v7572, 0
  %v7736 = vsel %vm1894, %v7577, 0
  %v7739 = vsel %vm1894, %v7582, 0
  %v7742 = vsel %vm1894, %v7587, 0
  %v7745 = vsel %vm1894, %v7592, 0
  %v7748 = vsel %vm1894, %v7597, 0
  %v7751 = vsel %vm1894, %v7602, 0
  %v7754 = vsel %vm1894, %v7607, 0
  %v7757 = vsel %vm1894, %v7612, 0
  %v7760 = vsel %vm1894, %v7617, 0
  %v7763 = vsel %vm1894, %v7622, 0
  %v7766 = vsel %vm1894, %v7627, 0
  %v7769 = vsel %vm1894, %v7632, 0
  %v7772 = vsel %vm1894, %v7637, 0
  %v7775 = vsel %vm1894, %v7642, 0
  %v7778 = vsel %vm1894, %v7647, 0
  %v7781 = vsel %vm1894, %v7652, 0
  %v7784 = vsel %vm1894, %v7657, 0
  %v7787 = vsel %vm1894, %v7662, 0
  %v7790 = vsel %vm1894, %v7667, 0
  %v7793 = vsel %vm1894, %v7672, 0
  %v7796 = vsel %vm1894, %v7677, 0
  %v7799 = vsel %vm1894, %v7682, 0
  %v7802 = vsel %vm1894, %v7687, 0
  %v7805 = vsel %vm1894, %v7692, 0
  %v7808 = vsel %vm1894, %v7697, 0
  %7810 = vmatprep.subr.mxu0 0.0
  %7811 = vmatpush1.msra.mxu0 0.0
  %7812 = vmatprep.subr.mxu0 0.0
  %7813 = vmatpush1.msra.mxu0 0.0
  %7814 = vmatprep.subr.mxu0 0.0
  %7815 = vmatpush1.msra.mxu0 0.0
  %7816 = vmatprep.subr.mxu0 0.0
  %7817 = vmatpush1.msra.mxu0 0.0
  %7818 = vmatprep.subr.mxu0 0.0
  %7819 = vmatpush1.msra.mxu0 0.0
  %7820 = vmatprep.subr.mxu0 0.0
  %7821 = vmatpush1.msra.mxu0 0.0
  %7822 = vmatprep.subr.mxu0 0.0
  %7823 = vmatpush1.msra.mxu0 0.0
  %7824 = vmatprep.subr.mxu0 0.0
  %7825 = vmatpush1.msra.mxu0 0.0
  %7826 = vmatprep.subr.mxu0 0.0
  %7827 = vmatpush1.msra.mxu0 0.0
  %7828 = vmatprep.subr.mxu0 0.0
  %7829 = vmatpush1.msra.mxu0 0.0
  %7830 = vmatprep.subr.mxu0 0.0
  %7831 = vmatpush1.msra.mxu0 0.0
  %7832 = vmatprep.subr.mxu0 0.0
  %7833 = vmatpush1.msra.mxu0 0.0
  %7834 = vmatprep.subr.mxu0 0.0
  %7835 = vmatpush1.msra.mxu0 0.0
  %7836 = vmatprep.subr.mxu0 0.0
  %7837 = vmatpush1.msra.mxu0 0.0
  %7838 = vmatprep.subr.mxu0 0.0
  %7839 = vmatpush1.msra.mxu0 0.0
  %7840 = vmatprep.subr.mxu0 0.0
  %7841 = vmatpush1.msra.mxu0 %v7701
  %7842 = vmatprep.subr.mxu0 0.0
  %7843 = vmatpush2.msra.mxu0 0.0
  %7844 = vmatprep.subr.mxu0 0.0
  %7845 = vmatpush2.msra.mxu0 0.0
  %7846 = vmatprep.subr.mxu0 0.0
  %7847 = vmatpush2.msra.mxu0 0.0
  %7848 = vmatprep.subr.mxu0 0.0
  %7849 = vmatpush2.msra.mxu0 0.0
  %7850 = vmatprep.subr.mxu0 0.0
  %7851 = vmatpush2.msra.mxu0 0.0
  %7852 = vmatprep.subr.mxu0 0.0
  %7853 = vmatpush2.msra.mxu0 0.0
  %7854 = vmatprep.subr.mxu0 0.0
  %7855 = vmatpush2.msra.mxu0 0.0
  %7856 = vmatprep.subr.mxu0 0.0
  %7857 = vmatpush2.msra.mxu0 0.0
  %7858 = vmatprep.subr.mxu0 0.0
  %7859 = vmatpush2.msra.mxu0 0.0
  %7860 = vmatprep.subr.mxu0 0.0
  %7861 = vmatpush2.msra.mxu0 0.0
  %7862 = vmatprep.subr.mxu0 0.0
  %7863 = vmatpush2.msra.mxu0 0.0
  %7864 = vmatprep.subr.mxu0 0.0
  %7865 = vmatpush2.msra.mxu0 0.0
  %7866 = vmatprep.subr.mxu0 0.0
  %7867 = vmatpush2.msra.mxu0 0.0
  %7868 = vmatprep.subr.mxu0 0.0
  %7869 = vmatpush2.msra.mxu0 0.0
  %7870 = vmatprep.subr.mxu0 0.0
  %7871 = vmatpush2.msra.mxu0 0.0
  %7872 = vmatprep.subr.mxu0 0.0
  %7873 = vmatpush2.msra.mxu0 0.0
  %7874 = vmatprep.mubr.f32.mxu0 0.0
  %7875 = vmatmul.mubr.f32.gmra.mxu0 %v7703
  %v7876 = vpop.f32.mrf.mxu0
  %v7877 = vadd.f32 0.0, %v7876
  %v7878 = vpop.f32.mrf.mxu0
  %7879 = vmatprep.mubr.f32.mxu0 0.0
  %7880 = vmatmul.mubr.f32.gmra.mxu0 %v7706
  %v7881 = vpop.f32.mrf.mxu0
  %v7882 = vadd.f32 0.0, %v7881
  %v7883 = vpop.f32.mrf.mxu0
  %7884 = vmatprep.mubr.f32.mxu0 0.0
  %7885 = vmatmul.mubr.f32.gmra.mxu0 %v7709
  %v7886 = vpop.f32.mrf.mxu0
  %v7887 = vadd.f32 0.0, %v7886
  %v7888 = vpop.f32.mrf.mxu0
  %7889 = vmatprep.mubr.f32.mxu0 0.0
  %7890 = vmatmul.mubr.f32.gmra.mxu0 %v7712
  %v7891 = vpop.f32.mrf.mxu0
  %v7892 = vadd.f32 0.0, %v7891
  %v7893 = vpop.f32.mrf.mxu0
  %7894 = vmatprep.mubr.f32.mxu0 0.0
  %7895 = vmatmul.mubr.f32.gmra.mxu0 %v7715
  %v7896 = vpop.f32.mrf.mxu0
  %v7897 = vadd.f32 0.0, %v7896
  %v7898 = vpop.f32.mrf.mxu0
  %7899 = vmatprep.mubr.f32.mxu0 0.0
  %7900 = vmatmul.mubr.f32.gmra.mxu0 %v7718
  %v7901 = vpop.f32.mrf.mxu0
  %v7902 = vadd.f32 0.0, %v7901
  %v7903 = vpop.f32.mrf.mxu0
  %7904 = vmatprep.mubr.f32.mxu0 0.0
  %7905 = vmatmul.mubr.f32.gmra.mxu0 %v7721
  %v7906 = vpop.f32.mrf.mxu0
  %v7907 = vadd.f32 0.0, %v7906
  %v7908 = vpop.f32.mrf.mxu0
  %7909 = vmatprep.mubr.f32.mxu0 0.0
  %7910 = vmatmul.mubr.f32.gmra.mxu0 %v7724
  %v7911 = vpop.f32.mrf.mxu0
  %v7912 = vadd.f32 0.0, %v7911
  %v7913 = vpop.f32.mrf.mxu0
  %7914 = vmatprep.mubr.f32.mxu0 0.0
  %7915 = vmatmul.mubr.f32.gmra.mxu0 %v7727
  %v7916 = vpop.f32.mrf.mxu0
  %v7917 = vadd.f32 0.0, %v7916
  %v7918 = vpop.f32.mrf.mxu0
  %7919 = vmatprep.mubr.f32.mxu0 0.0
  %7920 = vmatmul.mubr.f32.gmra.mxu0 %v7730
  %v7921 = vpop.f32.mrf.mxu0
  %v7922 = vadd.f32 0.0, %v7921
  %v7923 = vpop.f32.mrf.mxu0
  %7924 = vmatprep.mubr.f32.mxu0 0.0
  %7925 = vmatmul.mubr.f32.gmra.mxu0 %v7733
  %v7926 = vpop.f32.mrf.mxu0
  %v7927 = vadd.f32 0.0, %v7926
  %v7928 = vpop.f32.mrf.mxu0
  %7929 = vmatprep.mubr.f32.mxu0 0.0
  %7930 = vmatmul.mubr.f32.gmra.mxu0 %v7736
  %v7931 = vpop.f32.mrf.mxu0
  %v7932 = vadd.f32 0.0, %v7931
  %v7933 = vpop.f32.mrf.mxu0
  %7934 = vmatprep.mubr.f32.mxu0 0.0
  %7935 = vmatmul.mubr.f32.gmra.mxu0 %v7739
  %v7936 = vpop.f32.mrf.mxu0
  %v7937 = vadd.f32 0.0, %v7936
  %v7938 = vpop.f32.mrf.mxu0
  %7939 = vmatprep.mubr.f32.mxu0 0.0
  %7940 = vmatmul.mubr.f32.gmra.mxu0 %v7742
  %v7941 = vpop.f32.mrf.mxu0
  %v7942 = vadd.f32 0.0, %v7941
  %v7943 = vpop.f32.mrf.mxu0
  %7944 = vmatprep.mubr.f32.mxu0 0.0
  %7945 = vmatmul.mubr.f32.gmra.mxu0 %v7745
  %v7946 = vpop.f32.mrf.mxu0
  %v7947 = vadd.f32 0.0, %v7946
  %v7948 = vpop.f32.mrf.mxu0
  %7949 = vmatprep.mubr.f32.mxu0 0.0
  %7950 = vmatmul.mubr.f32.gmra.mxu0 %v7748
  %v7951 = vpop.f32.mrf.mxu0
  %v7952 = vadd.f32 0.0, %v7951
  %v7953 = vpop.f32.mrf.mxu0
  %7954 = vmatprep.mubr.f32.mxu0 0.0
  %7955 = vmatmul.mubr.f32.gmra.mxu0 %v7751
  %v7956 = vpop.f32.mrf.mxu0
  %v7957 = vadd.f32 0.0, %v7956
  %v7958 = vpop.f32.mrf.mxu0
  %7959 = vmatprep.mubr.f32.mxu0 0.0
  %7960 = vmatmul.mubr.f32.gmra.mxu0 %v7754
  %v7961 = vpop.f32.mrf.mxu0
  %v7962 = vadd.f32 0.0, %v7961
  %v7963 = vpop.f32.mrf.mxu0
  %7964 = vmatprep.mubr.f32.mxu0 0.0
  %7965 = vmatmul.mubr.f32.gmra.mxu0 %v7757
  %v7966 = vpop.f32.mrf.mxu0
  %v7967 = vadd.f32 0.0, %v7966
  %v7968 = vpop.f32.mrf.mxu0
  %7969 = vmatprep.mubr.f32.mxu0 0.0
  %7970 = vmatmul.mubr.f32.gmra.mxu0 %v7760
  %v7971 = vpop.f32.mrf.mxu0
  %v7972 = vadd.f32 0.0, %v7971
  %v7973 = vpop.f32.mrf.mxu0
  %7974 = vmatprep.mubr.f32.mxu0 0.0
  %7975 = vmatmul.mubr.f32.gmra.mxu0 %v7763
  %v7976 = vpop.f32.mrf.mxu0
  %v7977 = vadd.f32 0.0, %v7976
  %v7978 = vpop.f32.mrf.mxu0
  %7979 = vmatprep.mubr.f32.mxu0 0.0
  %7980 = vmatmul.mubr.f32.gmra.mxu0 %v7766
  %v7981 = vpop.f32.mrf.mxu0
  %v7982 = vadd.f32 0.0, %v7981
  %v7983 = vpop.f32.mrf.mxu0
  %7984 = vmatprep.mubr.f32.mxu0 0.0
  %7985 = vmatmul.mubr.f32.gmra.mxu0 %v7769
  %v7986 = vpop.f32.mrf.mxu0
  %v7987 = vadd.f32 0.0, %v7986
  %v7988 = vpop.f32.mrf.mxu0
  %7989 = vmatprep.mubr.f32.mxu0 0.0
  %7990 = vmatmul.mubr.f32.gmra.mxu0 %v7772
  %v7991 = vpop.f32.mrf.mxu0
  %v7992 = vadd.f32 0.0, %v7991
  %v7993 = vpop.f32.mrf.mxu0
  %7994 = vmatprep.mubr.f32.mxu0 0.0
  %7995 = vmatmul.mubr.f32.gmra.mxu0 %v7775
  %v7996 = vpop.f32.mrf.mxu0
  %v7997 = vadd.f32 0.0, %v7996
  %v7998 = vpop.f32.mrf.mxu0
  %7999 = vmatprep.mubr.f32.mxu0 0.0
  %8000 = vmatmul.mubr.f32.gmra.mxu0 %v7778
  %v8001 = vpop.f32.mrf.mxu0
  %v8002 = vadd.f32 0.0, %v8001
  %v8003 = vpop.f32.mrf.mxu0
  %8004 = vmatprep.mubr.f32.mxu0 0.0
  %8005 = vmatmul.mubr.f32.gmra.mxu0 %v7781
  %v8006 = vpop.f32.mrf.mxu0
  %v8007 = vadd.f32 0.0, %v8006
  %v8008 = vpop.f32.mrf.mxu0
  %8009 = vmatprep.mubr.f32.mxu0 0.0
  %8010 = vmatmul.mubr.f32.gmra.mxu0 %v7784
  %v8011 = vpop.f32.mrf.mxu0
  %v8012 = vadd.f32 0.0, %v8011
  %v8013 = vpop.f32.mrf.mxu0
  %8014 = vmatprep.mubr.f32.mxu0 0.0
  %8015 = vmatmul.mubr.f32.gmra.mxu0 %v7787
  %v8016 = vpop.f32.mrf.mxu0
  %v8017 = vadd.f32 0.0, %v8016
  %v8018 = vpop.f32.mrf.mxu0
  %8019 = vmatprep.mubr.f32.mxu0 0.0
  %8020 = vmatmul.mubr.f32.gmra.mxu0 %v7790
  %v8021 = vpop.f32.mrf.mxu0
  %v8022 = vadd.f32 0.0, %v8021
  %v8023 = vpop.f32.mrf.mxu0
  %8024 = vmatprep.mubr.f32.mxu0 0.0
  %8025 = vmatmul.mubr.f32.gmra.mxu0 %v7793
  %v8026 = vpop.f32.mrf.mxu0
  %v8027 = vadd.f32 0.0, %v8026
  %v8028 = vpop.f32.mrf.mxu0
  %8029 = vmatprep.mubr.f32.mxu0 0.0
  %8030 = vmatmul.mubr.f32.gmra.mxu0 %v7796
  %v8031 = vpop.f32.mrf.mxu0
  %v8032 = vadd.f32 0.0, %v8031
  %v8033 = vpop.f32.mrf.mxu0
  %8034 = vmatprep.mubr.f32.mxu0 0.0
  %8035 = vmatmul.mubr.f32.gmra.mxu0 %v7799
  %v8036 = vpop.f32.mrf.mxu0
  %v8037 = vadd.f32 0.0, %v8036
  %v8038 = vpop.f32.mrf.mxu0
  %8039 = vmatprep.mubr.f32.mxu0 0.0
  %8040 = vmatmul.mubr.f32.gmra.mxu0 %v7802
  %v8041 = vpop.f32.mrf.mxu0
  %v8042 = vadd.f32 0.0, %v8041
  %v8043 = vpop.f32.mrf.mxu0
  %8044 = vmatprep.mubr.f32.mxu0 0.0
  %8045 = vmatmul.mubr.f32.gmra.mxu0 %v7805
  %v8046 = vpop.f32.mrf.mxu0
  %v8047 = vadd.f32 0.0, %v8046
  %v8048 = vpop.f32.mrf.mxu0
  %8049 = vmatprep.mubr.f32.mxu0 0.0
  %8050 = vmatmul.mubr.f32.gmra.mxu0 %v7808
  %v8051 = vpop.f32.mrf.mxu0
  %v8052 = vadd.f32 0.0, %v8051
  %v8053 = vpop.f32.mrf.mxu0
  %8054 = vdwg.mxu0
  %v8055 = vadd.f32 %v6957, %v7877
  %v8056 = vadd.f32 %v6958, %v7882
  %v8057 = vadd.f32 %v6959, %v7887
  %v8058 = vadd.f32 %v6960, %v7892
  %v8059 = vadd.f32 %v6961, %v7897
  %v8060 = vadd.f32 %v6962, %v7902
  %v8061 = vadd.f32 %v6963, %v7907
  %v8062 = vadd.f32 %v6964, %v7912
  %v8063 = vadd.f32 %v6965, %v7917
  %v8064 = vadd.f32 %v6966, %v7922
  %v8065 = vadd.f32 %v6967, %v7927
  %v8066 = vadd.f32 %v6968, %v7932
  %v8067 = vadd.f32 %v6969, %v7937
  %v8068 = vadd.f32 %v6970, %v7942
  %v8069 = vadd.f32 %v6971, %v7947
  %v8070 = vadd.f32 %v6972, %v7952
  %v8071 = vadd.f32 %v6973, %v7957
  %v8072 = vadd.f32 %v6974, %v7962
  %v8073 = vadd.f32 %v6975, %v7967
  %v8074 = vadd.f32 %v6976, %v7972
  %v8075 = vadd.f32 %v6977, %v7977
  %v8076 = vadd.f32 %v6978, %v7982
  %v8077 = vadd.f32 %v6979, %v7987
  %v8078 = vadd.f32 %v6980, %v7992
  %v8079 = vadd.f32 %v6981, %v7997
  %v8080 = vadd.f32 %v6982, %v8002
  %v8081 = vadd.f32 %v6983, %v8007
  %v8082 = vadd.f32 %v6984, %v8012
  %v8083 = vadd.f32 %v6985, %v8017
  %v8084 = vadd.f32 %v6986, %v8022
  %v8085 = vadd.f32 %v6987, %v8027
  %v8086 = vadd.f32 %v6988, %v8032
  %v8087 = vadd.f32 %v6989, %v8037
  %v8088 = vadd.f32 %v6990, %v8042
  %v8089 = vadd.f32 %v6991, %v8047
  %v8090 = vadd.f32 %v6992, %v8052
  %s8091 = scalar_lea.vmem %s3, 6048
  %v8092 = vld [vmem:[%s8091] sm:$0xff]
  %v8093 = vld [vmem:[%s8091 + $0x8] sm:$0xff]
  %v8094 = vld [vmem:[%s8091 + $0x10] sm:$0xff]
  %v8095 = vld [vmem:[%s8091 + $0x18] sm:$0xff]
  %v8096 = vld [vmem:[%s8091 + $0x20] sm:$0xff]
  %v8097 = vld [vmem:[%s8091 + $0x28] sm:$0xff]
  %v8098 = vld [vmem:[%s8091 + $0x30] sm:$0xff]
  %v8099 = vld [vmem:[%s8091 + $0x38] sm:$0xff]
  %v8100 = vld [vmem:[%s8091 + $0x40] sm:$0xff]
  %v8101 = vld [vmem:[%s8091 + $0x48] sm:$0xff]
  %v8102 = vld [vmem:[%s8091 + $0x50] sm:$0xff]
  %v8103 = vld [vmem:[%s8091 + $0x58] sm:$0xff]
  %v8104 = vld [vmem:[%s8091 + $0x60] sm:$0xff]
  %v8105 = vld [vmem:[%s8091 + $0x68] sm:$0xff]
  %v8106 = vld [vmem:[%s8091 + $0x70] sm:$0xff]
  %v8107 = vld [vmem:[%s8091 + $0x78] sm:$0xff]
  %v8108 = vld [vmem:[%s8091 + $0x80] sm:$0xff]
  %v8109 = vld [vmem:[%s8091 + $0x88] sm:$0xff]
  %v8110 = vld [vmem:[%s8091 + $0x90] sm:$0xff]
  %v8111 = vld [vmem:[%s8091 + $0x98] sm:$0xff]
  %v8112 = vld [vmem:[%s8091 + $0xa0] sm:$0xff]
  %v8113 = vld [vmem:[%s8091 + $0xa8] sm:$0xff]
  %v8114 = vld [vmem:[%s8091 + $0xb0] sm:$0xff]
  %v8115 = vld [vmem:[%s8091 + $0xb8] sm:$0xff]
  %v8116 = vld [vmem:[%s8091 + $0xc0] sm:$0xff]
  %v8117 = vld [vmem:[%s8091 + $0xc8] sm:$0xff]
  %v8118 = vld [vmem:[%s8091 + $0xd0] sm:$0xff]
  %v8119 = vld [vmem:[%s8091 + $0xd8] sm:$0xff]
  %v8120 = vld [vmem:[%s8091 + $0xe0] sm:$0xff]
  %v8121 = vld [vmem:[%s8091 + $0xe8] sm:$0xff]
  %v8122 = vld [vmem:[%s8091 + $0xf0] sm:$0xff]
  %v8123 = vld [vmem:[%s8091 + $0xf8] sm:$0xff]
  %v8124 = vld [vmem:[%s8091 + $0x100] sm:$0xff]
  %v8125 = vld [vmem:[%s8091 + $0x108] sm:$0xff]
  %v8126 = vld [vmem:[%s8091 + $0x110] sm:$0xff]
  %v8127 = vld [vmem:[%s8091 + $0x118] sm:$0xff]
  %v8128 = vld [vmem:[%s8091 + $0x120] sm:$0xff]
  %v8129 = vld [vmem:[%s8091 + $0x128] sm:$0xff]
  %v8130 = vld [vmem:[%s8091 + $0x130] sm:$0xff]
  %v8131 = vld [vmem:[%s8091 + $0x138] sm:$0xff]
  %v8132 = vld [vmem:[%s8091 + $0x140] sm:$0xff]
  %v8133 = vld [vmem:[%s8091 + $0x148] sm:$0xff]
  %v8134 = vld [vmem:[%s8091 + $0x150] sm:$0xff]
  %v8135 = vld [vmem:[%s8091 + $0x158] sm:$0xff]
  %v8136 = vld [vmem:[%s8091 + $0x160] sm:$0xff]
  %v8137 = vld [vmem:[%s8091 + $0x168] sm:$0xff]
  %v8138 = vld [vmem:[%s8091 + $0x170] sm:$0xff]
  %v8139 = vld [vmem:[%s8091 + $0x178] sm:$0xff]
  %v8140 = vld [vmem:[%s8091 + $0x180] sm:$0xff]
  %v8141 = vld [vmem:[%s8091 + $0x188] sm:$0xff]
  %v8142 = vld [vmem:[%s8091 + $0x190] sm:$0xff]
  %v8143 = vld [vmem:[%s8091 + $0x198] sm:$0xff]
  %v8144 = vld [vmem:[%s8091 + $0x1a0] sm:$0xff]
  %v8145 = vld [vmem:[%s8091 + $0x1a8] sm:$0xff]
  %v8146 = vld [vmem:[%s8091 + $0x1b0] sm:$0xff]
  %v8147 = vld [vmem:[%s8091 + $0x1b8] sm:$0xff]
  %v8148 = vld [vmem:[%s8091 + $0x1c0] sm:$0xff]
  %v8149 = vld [vmem:[%s8091 + $0x1c8] sm:$0xff]
  %v8150 = vld [vmem:[%s8091 + $0x1d0] sm:$0xff]
  %v8151 = vld [vmem:[%s8091 + $0x1d8] sm:$0xff]
  %v8152 = vld [vmem:[%s8091 + $0x1e0] sm:$0xff]
  %v8153 = vld [vmem:[%s8091 + $0x1e8] sm:$0xff]
  %v8154 = vld [vmem:[%s8091 + $0x1f0] sm:$0xff]
  %v8155 = vld [vmem:[%s8091 + $0x1f8] sm:$0xff]
  %v8156 = vld [vmem:[%s8091 + $0x200] sm:$0xff]
  %v8157 = vld [vmem:[%s8091 + $0x208] sm:$0xff]
  %v8158 = vld [vmem:[%s8091 + $0x210] sm:$0xff]
  %v8159 = vld [vmem:[%s8091 + $0x218] sm:$0xff]
  %v8160 = vld [vmem:[%s8091 + $0x220] sm:$0xff]
  %v8161 = vld [vmem:[%s8091 + $0x228] sm:$0xff]
  %v8162 = vld [vmem:[%s8091 + $0x230] sm:$0xff]
  %v8163 = vld [vmem:[%s8091 + $0x238] sm:$0xff]
  %v8164 = vld [vmem:[%s8091 + $0x240] sm:$0xff]
  %v8165 = vld [vmem:[%s8091 + $0x248] sm:$0xff]
  %v8166 = vld [vmem:[%s8091 + $0x250] sm:$0xff]
  %v8167 = vld [vmem:[%s8091 + $0x258] sm:$0xff]
  %v8168 = vld [vmem:[%s8091 + $0x260] sm:$0xff]
  %v8169 = vld [vmem:[%s8091 + $0x268] sm:$0xff]
  %v8170 = vld [vmem:[%s8091 + $0x270] sm:$0xff]
  %v8171 = vld [vmem:[%s8091 + $0x278] sm:$0xff]
  %v8172 = vld [vmem:[%s8091 + $0x280] sm:$0xff]
  %v8173 = vld [vmem:[%s8091 + $0x288] sm:$0xff]
  %v8174 = vld [vmem:[%s8091 + $0x290] sm:$0xff]
  %v8175 = vld [vmem:[%s8091 + $0x298] sm:$0xff]
  %v8176 = vld [vmem:[%s8091 + $0x2a0] sm:$0xff]
  %v8177 = vld [vmem:[%s8091 + $0x2a8] sm:$0xff]
  %v8178 = vld [vmem:[%s8091 + $0x2b0] sm:$0xff]
  %v8179 = vld [vmem:[%s8091 + $0x2b8] sm:$0xff]
  %v8180 = vld [vmem:[%s8091 + $0x2c0] sm:$0xff]
  %v8181 = vld [vmem:[%s8091 + $0x2c8] sm:$0xff]
  %v8182 = vld [vmem:[%s8091 + $0x2d0] sm:$0xff]
  %v8183 = vld [vmem:[%s8091 + $0x2d8] sm:$0xff]
  %v8184 = vld [vmem:[%s8091 + $0x2e0] sm:$0xff]
  %v8185 = vld [vmem:[%s8091 + $0x2e8] sm:$0xff]
  %v8186 = vld [vmem:[%s8091 + $0x2f0] sm:$0xff]
  %v8187 = vld [vmem:[%s8091 + $0x2f8] sm:$0xff]
  %v8188 = vld [vmem:[%s8091 + $0x300] sm:$0xff]
  %v8189 = vld [vmem:[%s8091 + $0x308] sm:$0xff]
  %v8190 = vld [vmem:[%s8091 + $0x310] sm:$0xff]
  %v8191 = vld [vmem:[%s8091 + $0x318] sm:$0xff]
  %v8192 = vld [vmem:[%s8091 + $0x320] sm:$0xff]
  %v8193 = vld [vmem:[%s8091 + $0x328] sm:$0xff]
  %v8194 = vld [vmem:[%s8091 + $0x330] sm:$0xff]
  %v8195 = vld [vmem:[%s8091 + $0x338] sm:$0xff]
  %v8196 = vld [vmem:[%s8091 + $0x340] sm:$0xff]
  %v8197 = vld [vmem:[%s8091 + $0x348] sm:$0xff]
  %v8198 = vld [vmem:[%s8091 + $0x350] sm:$0xff]
  %v8199 = vld [vmem:[%s8091 + $0x358] sm:$0xff]
  %v8201 = vsel %vm88, %v8094, 0
  %v8204 = vsel %vm88, %v8097, 0
  %v8207 = vsel %vm88, %v8100, 0
  %v8210 = vsel %vm88, %v8103, 0
  %v8213 = vsel %vm88, %v8106, 0
  %v8216 = vsel %vm88, %v8109, 0
  %v8219 = vsel %vm88, %v8112, 0
  %v8222 = vsel %vm88, %v8115, 0
  %v8225 = vsel %vm88, %v8118, 0
  %v8228 = vsel %vm88, %v8121, 0
  %v8231 = vsel %vm88, %v8124, 0
  %v8234 = vsel %vm88, %v8127, 0
  %v8237 = vsel %vm88, %v8130, 0
  %v8240 = vsel %vm88, %v8133, 0
  %v8243 = vsel %vm88, %v8136, 0
  %v8246 = vsel %vm88, %v8139, 0
  %v8249 = vsel %vm88, %v8142, 0
  %v8252 = vsel %vm88, %v8145, 0
  %v8255 = vsel %vm88, %v8148, 0
  %v8258 = vsel %vm88, %v8151, 0
  %v8261 = vsel %vm88, %v8154, 0
  %v8264 = vsel %vm88, %v8157, 0
  %v8267 = vsel %vm88, %v8160, 0
  %v8270 = vsel %vm88, %v8163, 0
  %v8273 = vsel %vm88, %v8166, 0
  %v8276 = vsel %vm88, %v8169, 0
  %v8279 = vsel %vm88, %v8172, 0
  %v8282 = vsel %vm88, %v8175, 0
  %v8285 = vsel %vm88, %v8178, 0
  %v8288 = vsel %vm88, %v8181, 0
  %v8291 = vsel %vm88, %v8184, 0
  %v8294 = vsel %vm88, %v8187, 0
  %v8297 = vsel %vm88, %v8190, 0
  %v8300 = vsel %vm88, %v8193, 0
  %v8303 = vsel %vm88, %v8196, 0
  %v8306 = vsel %vm88, %v8199, 0
  %8308 = vmatprep.subr.mxu0 0.0
  %8309 = vmatpush1.msra.mxu0 %v457
  %8310 = vmatprep.subr.mxu0 0.0
  %8311 = vmatpush1.msra.mxu0 %v456
  %8312 = vmatprep.subr.mxu0 0.0
  %8313 = vmatpush1.msra.mxu0 %v455
  %8314 = vmatprep.subr.mxu0 0.0
  %8315 = vmatpush1.msra.mxu0 %v454
  %8316 = vmatprep.subr.mxu0 0.0
  %8317 = vmatpush1.msra.mxu0 %v453
  %8318 = vmatprep.subr.mxu0 0.0
  %8319 = vmatpush1.msra.mxu0 %v452
  %8320 = vmatprep.subr.mxu0 0.0
  %8321 = vmatpush1.msra.mxu0 %v451
  %8322 = vmatprep.subr.mxu0 0.0
  %8323 = vmatpush1.msra.mxu0 %v450
  %8324 = vmatprep.subr.mxu0 0.0
  %8325 = vmatpush1.msra.mxu0 %v449
  %8326 = vmatprep.subr.mxu0 0.0
  %8327 = vmatpush1.msra.mxu0 %v448
  %8328 = vmatprep.subr.mxu0 0.0
  %8329 = vmatpush1.msra.mxu0 %v447
  %8330 = vmatprep.subr.mxu0 0.0
  %8331 = vmatpush1.msra.mxu0 %v446
  %8332 = vmatprep.subr.mxu0 0.0
  %8333 = vmatpush1.msra.mxu0 %v445
  %8334 = vmatprep.subr.mxu0 0.0
  %8335 = vmatpush1.msra.mxu0 %v444
  %8336 = vmatprep.subr.mxu0 0.0
  %8337 = vmatpush1.msra.mxu0 %v443
  %8338 = vmatprep.subr.mxu0 0.0
  %8339 = vmatpush1.msra.mxu0 %v442
  %8340 = vmatprep.subr.mxu0 0.0
  %8341 = vmatpush2.msra.mxu0 %v473
  %8342 = vmatprep.subr.mxu0 0.0
  %8343 = vmatpush2.msra.mxu0 %v472
  %8344 = vmatprep.subr.mxu0 0.0
  %8345 = vmatpush2.msra.mxu0 %v471
  %8346 = vmatprep.subr.mxu0 0.0
  %8347 = vmatpush2.msra.mxu0 %v470
  %8348 = vmatprep.subr.mxu0 0.0
  %8349 = vmatpush2.msra.mxu0 %v469
  %8350 = vmatprep.subr.mxu0 0.0
  %8351 = vmatpush2.msra.mxu0 %v468
  %8352 = vmatprep.subr.mxu0 0.0
  %8353 = vmatpush2.msra.mxu0 %v467
  %8354 = vmatprep.subr.mxu0 0.0
  %8355 = vmatpush2.msra.mxu0 %v466
  %8356 = vmatprep.subr.mxu0 0.0
  %8357 = vmatpush2.msra.mxu0 %v465
  %8358 = vmatprep.subr.mxu0 0.0
  %8359 = vmatpush2.msra.mxu0 %v464
  %8360 = vmatprep.subr.mxu0 0.0
  %8361 = vmatpush2.msra.mxu0 %v463
  %8362 = vmatprep.subr.mxu0 0.0
  %8363 = vmatpush2.msra.mxu0 %v462
  %8364 = vmatprep.subr.mxu0 0.0
  %8365 = vmatpush2.msra.mxu0 %v461
  %8366 = vmatprep.subr.mxu0 0.0
  %8367 = vmatpush2.msra.mxu0 %v460
  %8368 = vmatprep.subr.mxu0 0.0
  %8369 = vmatpush2.msra.mxu0 %v459
  %8370 = vmatprep.subr.mxu0 0.0
  %8371 = vmatpush2.msra.mxu0 %v458
  %8372 = vmatprep.mubr.f32.mxu0 %v8093
  %8373 = vmatmul.mubr.f32.gmra.mxu0 %v8092
  %v8374 = vpop.f32.mrf.mxu0
  %v8375 = vadd.f32 0.0, %v8374
  %v8376 = vpop.f32.mrf.mxu0
  %8377 = vmatprep.mubr.f32.mxu0 %v8096
  %8378 = vmatmul.mubr.f32.gmra.mxu0 %v8095
  %v8379 = vpop.f32.mrf.mxu0
  %v8380 = vadd.f32 0.0, %v8379
  %v8381 = vpop.f32.mrf.mxu0
  %8382 = vmatprep.mubr.f32.mxu0 %v8099
  %8383 = vmatmul.mubr.f32.gmra.mxu0 %v8098
  %v8384 = vpop.f32.mrf.mxu0
  %v8385 = vadd.f32 0.0, %v8384
  %v8386 = vpop.f32.mrf.mxu0
  %8387 = vmatprep.mubr.f32.mxu0 %v8102
  %8388 = vmatmul.mubr.f32.gmra.mxu0 %v8101
  %v8389 = vpop.f32.mrf.mxu0
  %v8390 = vadd.f32 0.0, %v8389
  %v8391 = vpop.f32.mrf.mxu0
  %8392 = vmatprep.mubr.f32.mxu0 %v8105
  %8393 = vmatmul.mubr.f32.gmra.mxu0 %v8104
  %v8394 = vpop.f32.mrf.mxu0
  %v8395 = vadd.f32 0.0, %v8394
  %v8396 = vpop.f32.mrf.mxu0
  %8397 = vmatprep.mubr.f32.mxu0 %v8108
  %8398 = vmatmul.mubr.f32.gmra.mxu0 %v8107
  %v8399 = vpop.f32.mrf.mxu0
  %v8400 = vadd.f32 0.0, %v8399
  %v8401 = vpop.f32.mrf.mxu0
  %8402 = vmatprep.mubr.f32.mxu0 %v8111
  %8403 = vmatmul.mubr.f32.gmra.mxu0 %v8110
  %v8404 = vpop.f32.mrf.mxu0
  %v8405 = vadd.f32 0.0, %v8404
  %v8406 = vpop.f32.mrf.mxu0
  %8407 = vmatprep.mubr.f32.mxu0 %v8114
  %8408 = vmatmul.mubr.f32.gmra.mxu0 %v8113
  %v8409 = vpop.f32.mrf.mxu0
  %v8410 = vadd.f32 0.0, %v8409
  %v8411 = vpop.f32.mrf.mxu0
  %8412 = vmatprep.mubr.f32.mxu0 %v8117
  %8413 = vmatmul.mubr.f32.gmra.mxu0 %v8116
  %v8414 = vpop.f32.mrf.mxu0
  %v8415 = vadd.f32 0.0, %v8414
  %v8416 = vpop.f32.mrf.mxu0
  %8417 = vmatprep.mubr.f32.mxu0 %v8120
  %8418 = vmatmul.mubr.f32.gmra.mxu0 %v8119
  %v8419 = vpop.f32.mrf.mxu0
  %v8420 = vadd.f32 0.0, %v8419
  %v8421 = vpop.f32.mrf.mxu0
  %8422 = vmatprep.mubr.f32.mxu0 %v8123
  %8423 = vmatmul.mubr.f32.gmra.mxu0 %v8122
  %v8424 = vpop.f32.mrf.mxu0
  %v8425 = vadd.f32 0.0, %v8424
  %v8426 = vpop.f32.mrf.mxu0
  %8427 = vmatprep.mubr.f32.mxu0 %v8126
  %8428 = vmatmul.mubr.f32.gmra.mxu0 %v8125
  %v8429 = vpop.f32.mrf.mxu0
  %v8430 = vadd.f32 0.0, %v8429
  %v8431 = vpop.f32.mrf.mxu0
  %8432 = vmatprep.mubr.f32.mxu0 %v8129
  %8433 = vmatmul.mubr.f32.gmra.mxu0 %v8128
  %v8434 = vpop.f32.mrf.mxu0
  %v8435 = vadd.f32 0.0, %v8434
  %v8436 = vpop.f32.mrf.mxu0
  %8437 = vmatprep.mubr.f32.mxu0 %v8132
  %8438 = vmatmul.mubr.f32.gmra.mxu0 %v8131
  %v8439 = vpop.f32.mrf.mxu0
  %v8440 = vadd.f32 0.0, %v8439
  %v8441 = vpop.f32.mrf.mxu0
  %8442 = vmatprep.mubr.f32.mxu0 %v8135
  %8443 = vmatmul.mubr.f32.gmra.mxu0 %v8134
  %v8444 = vpop.f32.mrf.mxu0
  %v8445 = vadd.f32 0.0, %v8444
  %v8446 = vpop.f32.mrf.mxu0
  %8447 = vmatprep.mubr.f32.mxu0 %v8138
  %8448 = vmatmul.mubr.f32.gmra.mxu0 %v8137
  %v8449 = vpop.f32.mrf.mxu0
  %v8450 = vadd.f32 0.0, %v8449
  %v8451 = vpop.f32.mrf.mxu0
  %8452 = vmatprep.mubr.f32.mxu0 %v8141
  %8453 = vmatmul.mubr.f32.gmra.mxu0 %v8140
  %v8454 = vpop.f32.mrf.mxu0
  %v8455 = vadd.f32 0.0, %v8454
  %v8456 = vpop.f32.mrf.mxu0
  %8457 = vmatprep.mubr.f32.mxu0 %v8144
  %8458 = vmatmul.mubr.f32.gmra.mxu0 %v8143
  %v8459 = vpop.f32.mrf.mxu0
  %v8460 = vadd.f32 0.0, %v8459
  %v8461 = vpop.f32.mrf.mxu0
  %8462 = vmatprep.mubr.f32.mxu0 %v8147
  %8463 = vmatmul.mubr.f32.gmra.mxu0 %v8146
  %v8464 = vpop.f32.mrf.mxu0
  %v8465 = vadd.f32 0.0, %v8464
  %v8466 = vpop.f32.mrf.mxu0
  %8467 = vmatprep.mubr.f32.mxu0 %v8150
  %8468 = vmatmul.mubr.f32.gmra.mxu0 %v8149
  %v8469 = vpop.f32.mrf.mxu0
  %v8470 = vadd.f32 0.0, %v8469
  %v8471 = vpop.f32.mrf.mxu0
  %8472 = vmatprep.mubr.f32.mxu0 %v8153
  %8473 = vmatmul.mubr.f32.gmra.mxu0 %v8152
  %v8474 = vpop.f32.mrf.mxu0
  %v8475 = vadd.f32 0.0, %v8474
  %v8476 = vpop.f32.mrf.mxu0
  %8477 = vmatprep.mubr.f32.mxu0 %v8156
  %8478 = vmatmul.mubr.f32.gmra.mxu0 %v8155
  %v8479 = vpop.f32.mrf.mxu0
  %v8480 = vadd.f32 0.0, %v8479
  %v8481 = vpop.f32.mrf.mxu0
  %8482 = vmatprep.mubr.f32.mxu0 %v8159
  %8483 = vmatmul.mubr.f32.gmra.mxu0 %v8158
  %v8484 = vpop.f32.mrf.mxu0
  %v8485 = vadd.f32 0.0, %v8484
  %v8486 = vpop.f32.mrf.mxu0
  %8487 = vmatprep.mubr.f32.mxu0 %v8162
  %8488 = vmatmul.mubr.f32.gmra.mxu0 %v8161
  %v8489 = vpop.f32.mrf.mxu0
  %v8490 = vadd.f32 0.0, %v8489
  %v8491 = vpop.f32.mrf.mxu0
  %8492 = vmatprep.mubr.f32.mxu0 %v8165
  %8493 = vmatmul.mubr.f32.gmra.mxu0 %v8164
  %v8494 = vpop.f32.mrf.mxu0
  %v8495 = vadd.f32 0.0, %v8494
  %v8496 = vpop.f32.mrf.mxu0
  %8497 = vmatprep.mubr.f32.mxu0 %v8168
  %8498 = vmatmul.mubr.f32.gmra.mxu0 %v8167
  %v8499 = vpop.f32.mrf.mxu0
  %v8500 = vadd.f32 0.0, %v8499
  %v8501 = vpop.f32.mrf.mxu0
  %8502 = vmatprep.mubr.f32.mxu0 %v8171
  %8503 = vmatmul.mubr.f32.gmra.mxu0 %v8170
  %v8504 = vpop.f32.mrf.mxu0
  %v8505 = vadd.f32 0.0, %v8504
  %v8506 = vpop.f32.mrf.mxu0
  %8507 = vmatprep.mubr.f32.mxu0 %v8174
  %8508 = vmatmul.mubr.f32.gmra.mxu0 %v8173
  %v8509 = vpop.f32.mrf.mxu0
  %v8510 = vadd.f32 0.0, %v8509
  %v8511 = vpop.f32.mrf.mxu0
  %8512 = vmatprep.mubr.f32.mxu0 %v8177
  %8513 = vmatmul.mubr.f32.gmra.mxu0 %v8176
  %v8514 = vpop.f32.mrf.mxu0
  %v8515 = vadd.f32 0.0, %v8514
  %v8516 = vpop.f32.mrf.mxu0
  %8517 = vmatprep.mubr.f32.mxu0 %v8180
  %8518 = vmatmul.mubr.f32.gmra.mxu0 %v8179
  %v8519 = vpop.f32.mrf.mxu0
  %v8520 = vadd.f32 0.0, %v8519
  %v8521 = vpop.f32.mrf.mxu0
  %8522 = vmatprep.mubr.f32.mxu0 %v8183
  %8523 = vmatmul.mubr.f32.gmra.mxu0 %v8182
  %v8524 = vpop.f32.mrf.mxu0
  %v8525 = vadd.f32 0.0, %v8524
  %v8526 = vpop.f32.mrf.mxu0
  %8527 = vmatprep.mubr.f32.mxu0 %v8186
  %8528 = vmatmul.mubr.f32.gmra.mxu0 %v8185
  %v8529 = vpop.f32.mrf.mxu0
  %v8530 = vadd.f32 0.0, %v8529
  %v8531 = vpop.f32.mrf.mxu0
  %8532 = vmatprep.mubr.f32.mxu0 %v8189
  %8533 = vmatmul.mubr.f32.gmra.mxu0 %v8188
  %v8534 = vpop.f32.mrf.mxu0
  %v8535 = vadd.f32 0.0, %v8534
  %v8536 = vpop.f32.mrf.mxu0
  %8537 = vmatprep.mubr.f32.mxu0 %v8192
  %8538 = vmatmul.mubr.f32.gmra.mxu0 %v8191
  %v8539 = vpop.f32.mrf.mxu0
  %v8540 = vadd.f32 0.0, %v8539
  %v8541 = vpop.f32.mrf.mxu0
  %8542 = vmatprep.mubr.f32.mxu0 %v8195
  %8543 = vmatmul.mubr.f32.gmra.mxu0 %v8194
  %v8544 = vpop.f32.mrf.mxu0
  %v8545 = vadd.f32 0.0, %v8544
  %v8546 = vpop.f32.mrf.mxu0
  %8547 = vmatprep.mubr.f32.mxu0 %v8198
  %8548 = vmatmul.mubr.f32.gmra.mxu0 %v8197
  %v8549 = vpop.f32.mrf.mxu0
  %v8550 = vadd.f32 0.0, %v8549
  %v8551 = vpop.f32.mrf.mxu0
  %8552 = vdwg.mxu0
  %8553 = vmatprep.subr.mxu0 0.0
  %8554 = vmatpush1.msra.mxu0 0.0
  %8555 = vmatprep.subr.mxu0 0.0
  %8556 = vmatpush1.msra.mxu0 0.0
  %8557 = vmatprep.subr.mxu0 0.0
  %8558 = vmatpush1.msra.mxu0 0.0
  %8559 = vmatprep.subr.mxu0 0.0
  %8560 = vmatpush1.msra.mxu0 0.0
  %8561 = vmatprep.subr.mxu0 0.0
  %8562 = vmatpush1.msra.mxu0 0.0
  %8563 = vmatprep.subr.mxu0 0.0
  %8564 = vmatpush1.msra.mxu0 0.0
  %8565 = vmatprep.subr.mxu0 0.0
  %8566 = vmatpush1.msra.mxu0 0.0
  %8567 = vmatprep.subr.mxu0 0.0
  %8568 = vmatpush1.msra.mxu0 0.0
  %8569 = vmatprep.subr.mxu0 0.0
  %8570 = vmatpush1.msra.mxu0 0.0
  %8571 = vmatprep.subr.mxu0 0.0
  %8572 = vmatpush1.msra.mxu0 0.0
  %8573 = vmatprep.subr.mxu0 0.0
  %8574 = vmatpush1.msra.mxu0 0.0
  %8575 = vmatprep.subr.mxu0 0.0
  %8576 = vmatpush1.msra.mxu0 0.0
  %8577 = vmatprep.subr.mxu0 0.0
  %8578 = vmatpush1.msra.mxu0 %v477
  %8579 = vmatprep.subr.mxu0 0.0
  %8580 = vmatpush1.msra.mxu0 %v476
  %8581 = vmatprep.subr.mxu0 0.0
  %8582 = vmatpush1.msra.mxu0 %v475
  %8583 = vmatprep.subr.mxu0 0.0
  %8584 = vmatpush1.msra.mxu0 %v474
  %8585 = vmatprep.subr.mxu0 0.0
  %8586 = vmatpush2.msra.mxu0 0.0
  %8587 = vmatprep.subr.mxu0 0.0
  %8588 = vmatpush2.msra.mxu0 0.0
  %8589 = vmatprep.subr.mxu0 0.0
  %8590 = vmatpush2.msra.mxu0 0.0
  %8591 = vmatprep.subr.mxu0 0.0
  %8592 = vmatpush2.msra.mxu0 0.0
  %8593 = vmatprep.subr.mxu0 0.0
  %8594 = vmatpush2.msra.mxu0 0.0
  %8595 = vmatprep.subr.mxu0 0.0
  %8596 = vmatpush2.msra.mxu0 0.0
  %8597 = vmatprep.subr.mxu0 0.0
  %8598 = vmatpush2.msra.mxu0 0.0
  %8599 = vmatprep.subr.mxu0 0.0
  %8600 = vmatpush2.msra.mxu0 0.0
  %8601 = vmatprep.subr.mxu0 0.0
  %8602 = vmatpush2.msra.mxu0 0.0
  %8603 = vmatprep.subr.mxu0 0.0
  %8604 = vmatpush2.msra.mxu0 0.0
  %8605 = vmatprep.subr.mxu0 0.0
  %8606 = vmatpush2.msra.mxu0 0.0
  %8607 = vmatprep.subr.mxu0 0.0
  %8608 = vmatpush2.msra.mxu0 0.0
  %8609 = vmatprep.subr.mxu0 0.0
  %8610 = vmatpush2.msra.mxu0 0.0
  %8611 = vmatprep.subr.mxu0 0.0
  %8612 = vmatpush2.msra.mxu0 0.0
  %8613 = vmatprep.subr.mxu0 0.0
  %8614 = vmatpush2.msra.mxu0 0.0
  %8615 = vmatprep.subr.mxu0 0.0
  %8616 = vmatpush2.msra.mxu0 0.0
  %8617 = vmatprep.mubr.f32.mxu0 0.0
  %8618 = vmatmul.mubr.f32.gmra.mxu0 %v8201
  %v8619 = vpop.f32.mrf.mxu0
  %v8620 = vadd.f32 %v8375, %v8619
  %v8621 = vpop.f32.mrf.mxu0
  %8622 = vmatprep.mubr.f32.mxu0 0.0
  %8623 = vmatmul.mubr.f32.gmra.mxu0 %v8204
  %v8624 = vpop.f32.mrf.mxu0
  %v8625 = vadd.f32 %v8380, %v8624
  %v8626 = vpop.f32.mrf.mxu0
  %8627 = vmatprep.mubr.f32.mxu0 0.0
  %8628 = vmatmul.mubr.f32.gmra.mxu0 %v8207
  %v8629 = vpop.f32.mrf.mxu0
  %v8630 = vadd.f32 %v8385, %v8629
  %v8631 = vpop.f32.mrf.mxu0
  %8632 = vmatprep.mubr.f32.mxu0 0.0
  %8633 = vmatmul.mubr.f32.gmra.mxu0 %v8210
  %v8634 = vpop.f32.mrf.mxu0
  %v8635 = vadd.f32 %v8390, %v8634
  %v8636 = vpop.f32.mrf.mxu0
  %8637 = vmatprep.mubr.f32.mxu0 0.0
  %8638 = vmatmul.mubr.f32.gmra.mxu0 %v8213
  %v8639 = vpop.f32.mrf.mxu0
  %v8640 = vadd.f32 %v8395, %v8639
  %v8641 = vpop.f32.mrf.mxu0
  %8642 = vmatprep.mubr.f32.mxu0 0.0
  %8643 = vmatmul.mubr.f32.gmra.mxu0 %v8216
  %v8644 = vpop.f32.mrf.mxu0
  %v8645 = vadd.f32 %v8400, %v8644
  %v8646 = vpop.f32.mrf.mxu0
  %8647 = vmatprep.mubr.f32.mxu0 0.0
  %8648 = vmatmul.mubr.f32.gmra.mxu0 %v8219
  %v8649 = vpop.f32.mrf.mxu0
  %v8650 = vadd.f32 %v8405, %v8649
  %v8651 = vpop.f32.mrf.mxu0
  %8652 = vmatprep.mubr.f32.mxu0 0.0
  %8653 = vmatmul.mubr.f32.gmra.mxu0 %v8222
  %v8654 = vpop.f32.mrf.mxu0
  %v8655 = vadd.f32 %v8410, %v8654
  %v8656 = vpop.f32.mrf.mxu0
  %8657 = vmatprep.mubr.f32.mxu0 0.0
  %8658 = vmatmul.mubr.f32.gmra.mxu0 %v8225
  %v8659 = vpop.f32.mrf.mxu0
  %v8660 = vadd.f32 %v8415, %v8659
  %v8661 = vpop.f32.mrf.mxu0
  %8662 = vmatprep.mubr.f32.mxu0 0.0
  %8663 = vmatmul.mubr.f32.gmra.mxu0 %v8228
  %v8664 = vpop.f32.mrf.mxu0
  %v8665 = vadd.f32 %v8420, %v8664
  %v8666 = vpop.f32.mrf.mxu0
  %8667 = vmatprep.mubr.f32.mxu0 0.0
  %8668 = vmatmul.mubr.f32.gmra.mxu0 %v8231
  %v8669 = vpop.f32.mrf.mxu0
  %v8670 = vadd.f32 %v8425, %v8669
  %v8671 = vpop.f32.mrf.mxu0
  %8672 = vmatprep.mubr.f32.mxu0 0.0
  %8673 = vmatmul.mubr.f32.gmra.mxu0 %v8234
  %v8674 = vpop.f32.mrf.mxu0
  %v8675 = vadd.f32 %v8430, %v8674
  %v8676 = vpop.f32.mrf.mxu0
  %8677 = vmatprep.mubr.f32.mxu0 0.0
  %8678 = vmatmul.mubr.f32.gmra.mxu0 %v8237
  %v8679 = vpop.f32.mrf.mxu0
  %v8680 = vadd.f32 %v8435, %v8679
  %v8681 = vpop.f32.mrf.mxu0
  %8682 = vmatprep.mubr.f32.mxu0 0.0
  %8683 = vmatmul.mubr.f32.gmra.mxu0 %v8240
  %v8684 = vpop.f32.mrf.mxu0
  %v8685 = vadd.f32 %v8440, %v8684
  %v8686 = vpop.f32.mrf.mxu0
  %8687 = vmatprep.mubr.f32.mxu0 0.0
  %8688 = vmatmul.mubr.f32.gmra.mxu0 %v8243
  %v8689 = vpop.f32.mrf.mxu0
  %v8690 = vadd.f32 %v8445, %v8689
  %v8691 = vpop.f32.mrf.mxu0
  %8692 = vmatprep.mubr.f32.mxu0 0.0
  %8693 = vmatmul.mubr.f32.gmra.mxu0 %v8246
  %v8694 = vpop.f32.mrf.mxu0
  %v8695 = vadd.f32 %v8450, %v8694
  %v8696 = vpop.f32.mrf.mxu0
  %8697 = vmatprep.mubr.f32.mxu0 0.0
  %8698 = vmatmul.mubr.f32.gmra.mxu0 %v8249
  %v8699 = vpop.f32.mrf.mxu0
  %v8700 = vadd.f32 %v8455, %v8699
  %v8701 = vpop.f32.mrf.mxu0
  %8702 = vmatprep.mubr.f32.mxu0 0.0
  %8703 = vmatmul.mubr.f32.gmra.mxu0 %v8252
  %v8704 = vpop.f32.mrf.mxu0
  %v8705 = vadd.f32 %v8460, %v8704
  %v8706 = vpop.f32.mrf.mxu0
  %8707 = vmatprep.mubr.f32.mxu0 0.0
  %8708 = vmatmul.mubr.f32.gmra.mxu0 %v8255
  %v8709 = vpop.f32.mrf.mxu0
  %v8710 = vadd.f32 %v8465, %v8709
  %v8711 = vpop.f32.mrf.mxu0
  %8712 = vmatprep.mubr.f32.mxu0 0.0
  %8713 = vmatmul.mubr.f32.gmra.mxu0 %v8258
  %v8714 = vpop.f32.mrf.mxu0
  %v8715 = vadd.f32 %v8470, %v8714
  %v8716 = vpop.f32.mrf.mxu0
  %8717 = vmatprep.mubr.f32.mxu0 0.0
  %8718 = vmatmul.mubr.f32.gmra.mxu0 %v8261
  %v8719 = vpop.f32.mrf.mxu0
  %v8720 = vadd.f32 %v8475, %v8719
  %v8721 = vpop.f32.mrf.mxu0
  %8722 = vmatprep.mubr.f32.mxu0 0.0
  %8723 = vmatmul.mubr.f32.gmra.mxu0 %v8264
  %v8724 = vpop.f32.mrf.mxu0
  %v8725 = vadd.f32 %v8480, %v8724
  %v8726 = vpop.f32.mrf.mxu0
  %8727 = vmatprep.mubr.f32.mxu0 0.0
  %8728 = vmatmul.mubr.f32.gmra.mxu0 %v8267
  %v8729 = vpop.f32.mrf.mxu0
  %v8730 = vadd.f32 %v8485, %v8729
  %v8731 = vpop.f32.mrf.mxu0
  %8732 = vmatprep.mubr.f32.mxu0 0.0
  %8733 = vmatmul.mubr.f32.gmra.mxu0 %v8270
  %v8734 = vpop.f32.mrf.mxu0
  %v8735 = vadd.f32 %v8490, %v8734
  %v8736 = vpop.f32.mrf.mxu0
  %8737 = vmatprep.mubr.f32.mxu0 0.0
  %8738 = vmatmul.mubr.f32.gmra.mxu0 %v8273
  %v8739 = vpop.f32.mrf.mxu0
  %v8740 = vadd.f32 %v8495, %v8739
  %v8741 = vpop.f32.mrf.mxu0
  %8742 = vmatprep.mubr.f32.mxu0 0.0
  %8743 = vmatmul.mubr.f32.gmra.mxu0 %v8276
  %v8744 = vpop.f32.mrf.mxu0
  %v8745 = vadd.f32 %v8500, %v8744
  %v8746 = vpop.f32.mrf.mxu0
  %8747 = vmatprep.mubr.f32.mxu0 0.0
  %8748 = vmatmul.mubr.f32.gmra.mxu0 %v8279
  %v8749 = vpop.f32.mrf.mxu0
  %v8750 = vadd.f32 %v8505, %v8749
  %v8751 = vpop.f32.mrf.mxu0
  %8752 = vmatprep.mubr.f32.mxu0 0.0
  %8753 = vmatmul.mubr.f32.gmra.mxu0 %v8282
  %v8754 = vpop.f32.mrf.mxu0
  %v8755 = vadd.f32 %v8510, %v8754
  %v8756 = vpop.f32.mrf.mxu0
  %8757 = vmatprep.mubr.f32.mxu0 0.0
  %8758 = vmatmul.mubr.f32.gmra.mxu0 %v8285
  %v8759 = vpop.f32.mrf.mxu0
  %v8760 = vadd.f32 %v8515, %v8759
  %v8761 = vpop.f32.mrf.mxu0
  %8762 = vmatprep.mubr.f32.mxu0 0.0
  %8763 = vmatmul.mubr.f32.gmra.mxu0 %v8288
  %v8764 = vpop.f32.mrf.mxu0
  %v8765 = vadd.f32 %v8520, %v8764
  %v8766 = vpop.f32.mrf.mxu0
  %8767 = vmatprep.mubr.f32.mxu0 0.0
  %8768 = vmatmul.mubr.f32.gmra.mxu0 %v8291
  %v8769 = vpop.f32.mrf.mxu0
  %v8770 = vadd.f32 %v8525, %v8769
  %v8771 = vpop.f32.mrf.mxu0
  %8772 = vmatprep.mubr.f32.mxu0 0.0
  %8773 = vmatmul.mubr.f32.gmra.mxu0 %v8294
  %v8774 = vpop.f32.mrf.mxu0
  %v8775 = vadd.f32 %v8530, %v8774
  %v8776 = vpop.f32.mrf.mxu0
  %8777 = vmatprep.mubr.f32.mxu0 0.0
  %8778 = vmatmul.mubr.f32.gmra.mxu0 %v8297
  %v8779 = vpop.f32.mrf.mxu0
  %v8780 = vadd.f32 %v8535, %v8779
  %v8781 = vpop.f32.mrf.mxu0
  %8782 = vmatprep.mubr.f32.mxu0 0.0
  %8783 = vmatmul.mubr.f32.gmra.mxu0 %v8300
  %v8784 = vpop.f32.mrf.mxu0
  %v8785 = vadd.f32 %v8540, %v8784
  %v8786 = vpop.f32.mrf.mxu0
  %8787 = vmatprep.mubr.f32.mxu0 0.0
  %8788 = vmatmul.mubr.f32.gmra.mxu0 %v8303
  %v8789 = vpop.f32.mrf.mxu0
  %v8790 = vadd.f32 %v8545, %v8789
  %v8791 = vpop.f32.mrf.mxu0
  %8792 = vmatprep.mubr.f32.mxu0 0.0
  %8793 = vmatmul.mubr.f32.gmra.mxu0 %v8306
  %v8794 = vpop.f32.mrf.mxu0
  %v8795 = vadd.f32 %v8550, %v8794
  %v8796 = vpop.f32.mrf.mxu0
  %8797 = vdwg.mxu0
  %s8798 = scalar_lea.vmem %s4, 56
  %v8799 = vld [vmem:[%s8798] sm:$0xff]
  %v8801 = vsel %vm1894, %v8620, 0
  %v8804 = vsel %vm1894, %v8625, 0
  %v8807 = vsel %vm1894, %v8630, 0
  %v8810 = vsel %vm1894, %v8635, 0
  %v8813 = vsel %vm1894, %v8640, 0
  %v8816 = vsel %vm1894, %v8645, 0
  %v8819 = vsel %vm1894, %v8650, 0
  %v8822 = vsel %vm1894, %v8655, 0
  %v8825 = vsel %vm1894, %v8660, 0
  %v8828 = vsel %vm1894, %v8665, 0
  %v8831 = vsel %vm1894, %v8670, 0
  %v8834 = vsel %vm1894, %v8675, 0
  %v8837 = vsel %vm1894, %v8680, 0
  %v8840 = vsel %vm1894, %v8685, 0
  %v8843 = vsel %vm1894, %v8690, 0
  %v8846 = vsel %vm1894, %v8695, 0
  %v8849 = vsel %vm1894, %v8700, 0
  %v8852 = vsel %vm1894, %v8705, 0
  %v8855 = vsel %vm1894, %v8710, 0
  %v8858 = vsel %vm1894, %v8715, 0
  %v8861 = vsel %vm1894, %v8720, 0
  %v8864 = vsel %vm1894, %v8725, 0
  %v8867 = vsel %vm1894, %v8730, 0
  %v8870 = vsel %vm1894, %v8735, 0
  %v8873 = vsel %vm1894, %v8740, 0
  %v8876 = vsel %vm1894, %v8745, 0
  %v8879 = vsel %vm1894, %v8750, 0
  %v8882 = vsel %vm1894, %v8755, 0
  %v8885 = vsel %vm1894, %v8760, 0
  %v8888 = vsel %vm1894, %v8765, 0
  %v8891 = vsel %vm1894, %v8770, 0
  %v8894 = vsel %vm1894, %v8775, 0
  %v8897 = vsel %vm1894, %v8780, 0
  %v8900 = vsel %vm1894, %v8785, 0
  %v8903 = vsel %vm1894, %v8790, 0
  %v8906 = vsel %vm1894, %v8795, 0
  %8908 = vmatprep.subr.mxu0 0.0
  %8909 = vmatpush1.msra.mxu0 0.0
  %8910 = vmatprep.subr.mxu0 0.0
  %8911 = vmatpush1.msra.mxu0 0.0
  %8912 = vmatprep.subr.mxu0 0.0
  %8913 = vmatpush1.msra.mxu0 0.0
  %8914 = vmatprep.subr.mxu0 0.0
  %8915 = vmatpush1.msra.mxu0 0.0
  %8916 = vmatprep.subr.mxu0 0.0
  %8917 = vmatpush1.msra.mxu0 0.0
  %8918 = vmatprep.subr.mxu0 0.0
  %8919 = vmatpush1.msra.mxu0 0.0
  %8920 = vmatprep.subr.mxu0 0.0
  %8921 = vmatpush1.msra.mxu0 0.0
  %8922 = vmatprep.subr.mxu0 0.0
  %8923 = vmatpush1.msra.mxu0 0.0
  %8924 = vmatprep.subr.mxu0 0.0
  %8925 = vmatpush1.msra.mxu0 0.0
  %8926 = vmatprep.subr.mxu0 0.0
  %8927 = vmatpush1.msra.mxu0 0.0
  %8928 = vmatprep.subr.mxu0 0.0
  %8929 = vmatpush1.msra.mxu0 0.0
  %8930 = vmatprep.subr.mxu0 0.0
  %8931 = vmatpush1.msra.mxu0 0.0
  %8932 = vmatprep.subr.mxu0 0.0
  %8933 = vmatpush1.msra.mxu0 0.0
  %8934 = vmatprep.subr.mxu0 0.0
  %8935 = vmatpush1.msra.mxu0 0.0
  %8936 = vmatprep.subr.mxu0 0.0
  %8937 = vmatpush1.msra.mxu0 0.0
  %8938 = vmatprep.subr.mxu0 0.0
  %8939 = vmatpush1.msra.mxu0 %v8799
  %8940 = vmatprep.subr.mxu0 0.0
  %8941 = vmatpush2.msra.mxu0 0.0
  %8942 = vmatprep.subr.mxu0 0.0
  %8943 = vmatpush2.msra.mxu0 0.0
  %8944 = vmatprep.subr.mxu0 0.0
  %8945 = vmatpush2.msra.mxu0 0.0
  %8946 = vmatprep.subr.mxu0 0.0
  %8947 = vmatpush2.msra.mxu0 0.0
  %8948 = vmatprep.subr.mxu0 0.0
  %8949 = vmatpush2.msra.mxu0 0.0
  %8950 = vmatprep.subr.mxu0 0.0
  %8951 = vmatpush2.msra.mxu0 0.0
  %8952 = vmatprep.subr.mxu0 0.0
  %8953 = vmatpush2.msra.mxu0 0.0
  %8954 = vmatprep.subr.mxu0 0.0
  %8955 = vmatpush2.msra.mxu0 0.0
  %8956 = vmatprep.subr.mxu0 0.0
  %8957 = vmatpush2.msra.mxu0 0.0
  %8958 = vmatprep.subr.mxu0 0.0
  %8959 = vmatpush2.msra.mxu0 0.0
  %8960 = vmatprep.subr.mxu0 0.0
  %8961 = vmatpush2.msra.mxu0 0.0
  %8962 = vmatprep.subr.mxu0 0.0
  %8963 = vmatpush2.msra.mxu0 0.0
  %8964 = vmatprep.subr.mxu0 0.0
  %8965 = vmatpush2.msra.mxu0 0.0
  %8966 = vmatprep.subr.mxu0 0.0
  %8967 = vmatpush2.msra.mxu0 0.0
  %8968 = vmatprep.subr.mxu0 0.0
  %8969 = vmatpush2.msra.mxu0 0.0
  %8970 = vmatprep.subr.mxu0 0.0
  %8971 = vmatpush2.msra.mxu0 0.0
  %8972 = vmatprep.mubr.f32.mxu0 0.0
  %8973 = vmatmul.mubr.f32.gmra.mxu0 %v8801
  %v8974 = vpop.f32.mrf.mxu0
  %v8975 = vadd.f32 0.0, %v8974
  %v8976 = vpop.f32.mrf.mxu0
  %8977 = vmatprep.mubr.f32.mxu0 0.0
  %8978 = vmatmul.mubr.f32.gmra.mxu0 %v8804
  %v8979 = vpop.f32.mrf.mxu0
  %v8980 = vadd.f32 0.0, %v8979
  %v8981 = vpop.f32.mrf.mxu0
  %8982 = vmatprep.mubr.f32.mxu0 0.0
  %8983 = vmatmul.mubr.f32.gmra.mxu0 %v8807
  %v8984 = vpop.f32.mrf.mxu0
  %v8985 = vadd.f32 0.0, %v8984
  %v8986 = vpop.f32.mrf.mxu0
  %8987 = vmatprep.mubr.f32.mxu0 0.0
  %8988 = vmatmul.mubr.f32.gmra.mxu0 %v8810
  %v8989 = vpop.f32.mrf.mxu0
  %v8990 = vadd.f32 0.0, %v8989
  %v8991 = vpop.f32.mrf.mxu0
  %8992 = vmatprep.mubr.f32.mxu0 0.0
  %8993 = vmatmul.mubr.f32.gmra.mxu0 %v8813
  %v8994 = vpop.f32.mrf.mxu0
  %v8995 = vadd.f32 0.0, %v8994
  %v8996 = vpop.f32.mrf.mxu0
  %8997 = vmatprep.mubr.f32.mxu0 0.0
  %8998 = vmatmul.mubr.f32.gmra.mxu0 %v8816
  %v8999 = vpop.f32.mrf.mxu0
  %v9000 = vadd.f32 0.0, %v8999
  %v9001 = vpop.f32.mrf.mxu0
  %9002 = vmatprep.mubr.f32.mxu0 0.0
  %9003 = vmatmul.mubr.f32.gmra.mxu0 %v8819
  %v9004 = vpop.f32.mrf.mxu0
  %v9005 = vadd.f32 0.0, %v9004
  %v9006 = vpop.f32.mrf.mxu0
  %9007 = vmatprep.mubr.f32.mxu0 0.0
  %9008 = vmatmul.mubr.f32.gmra.mxu0 %v8822
  %v9009 = vpop.f32.mrf.mxu0
  %v9010 = vadd.f32 0.0, %v9009
  %v9011 = vpop.f32.mrf.mxu0
  %9012 = vmatprep.mubr.f32.mxu0 0.0
  %9013 = vmatmul.mubr.f32.gmra.mxu0 %v8825
  %v9014 = vpop.f32.mrf.mxu0
  %v9015 = vadd.f32 0.0, %v9014
  %v9016 = vpop.f32.mrf.mxu0
  %9017 = vmatprep.mubr.f32.mxu0 0.0
  %9018 = vmatmul.mubr.f32.gmra.mxu0 %v8828
  %v9019 = vpop.f32.mrf.mxu0
  %v9020 = vadd.f32 0.0, %v9019
  %v9021 = vpop.f32.mrf.mxu0
  %9022 = vmatprep.mubr.f32.mxu0 0.0
  %9023 = vmatmul.mubr.f32.gmra.mxu0 %v8831
  %v9024 = vpop.f32.mrf.mxu0
  %v9025 = vadd.f32 0.0, %v9024
  %v9026 = vpop.f32.mrf.mxu0
  %9027 = vmatprep.mubr.f32.mxu0 0.0
  %9028 = vmatmul.mubr.f32.gmra.mxu0 %v8834
  %v9029 = vpop.f32.mrf.mxu0
  %v9030 = vadd.f32 0.0, %v9029
  %v9031 = vpop.f32.mrf.mxu0
  %9032 = vmatprep.mubr.f32.mxu0 0.0
  %9033 = vmatmul.mubr.f32.gmra.mxu0 %v8837
  %v9034 = vpop.f32.mrf.mxu0
  %v9035 = vadd.f32 0.0, %v9034
  %v9036 = vpop.f32.mrf.mxu0
  %9037 = vmatprep.mubr.f32.mxu0 0.0
  %9038 = vmatmul.mubr.f32.gmra.mxu0 %v8840
  %v9039 = vpop.f32.mrf.mxu0
  %v9040 = vadd.f32 0.0, %v9039
  %v9041 = vpop.f32.mrf.mxu0
  %9042 = vmatprep.mubr.f32.mxu0 0.0
  %9043 = vmatmul.mubr.f32.gmra.mxu0 %v8843
  %v9044 = vpop.f32.mrf.mxu0
  %v9045 = vadd.f32 0.0, %v9044
  %v9046 = vpop.f32.mrf.mxu0
  %9047 = vmatprep.mubr.f32.mxu0 0.0
  %9048 = vmatmul.mubr.f32.gmra.mxu0 %v8846
  %v9049 = vpop.f32.mrf.mxu0
  %v9050 = vadd.f32 0.0, %v9049
  %v9051 = vpop.f32.mrf.mxu0
  %9052 = vmatprep.mubr.f32.mxu0 0.0
  %9053 = vmatmul.mubr.f32.gmra.mxu0 %v8849
  %v9054 = vpop.f32.mrf.mxu0
  %v9055 = vadd.f32 0.0, %v9054
  %v9056 = vpop.f32.mrf.mxu0
  %9057 = vmatprep.mubr.f32.mxu0 0.0
  %9058 = vmatmul.mubr.f32.gmra.mxu0 %v8852
  %v9059 = vpop.f32.mrf.mxu0
  %v9060 = vadd.f32 0.0, %v9059
  %v9061 = vpop.f32.mrf.mxu0
  %9062 = vmatprep.mubr.f32.mxu0 0.0
  %9063 = vmatmul.mubr.f32.gmra.mxu0 %v8855
  %v9064 = vpop.f32.mrf.mxu0
  %v9065 = vadd.f32 0.0, %v9064
  %v9066 = vpop.f32.mrf.mxu0
  %9067 = vmatprep.mubr.f32.mxu0 0.0
  %9068 = vmatmul.mubr.f32.gmra.mxu0 %v8858
  %v9069 = vpop.f32.mrf.mxu0
  %v9070 = vadd.f32 0.0, %v9069
  %v9071 = vpop.f32.mrf.mxu0
  %9072 = vmatprep.mubr.f32.mxu0 0.0
  %9073 = vmatmul.mubr.f32.gmra.mxu0 %v8861
  %v9074 = vpop.f32.mrf.mxu0
  %v9075 = vadd.f32 0.0, %v9074
  %v9076 = vpop.f32.mrf.mxu0
  %9077 = vmatprep.mubr.f32.mxu0 0.0
  %9078 = vmatmul.mubr.f32.gmra.mxu0 %v8864
  %v9079 = vpop.f32.mrf.mxu0
  %v9080 = vadd.f32 0.0, %v9079
  %v9081 = vpop.f32.mrf.mxu0
  %9082 = vmatprep.mubr.f32.mxu0 0.0
  %9083 = vmatmul.mubr.f32.gmra.mxu0 %v8867
  %v9084 = vpop.f32.mrf.mxu0
  %v9085 = vadd.f32 0.0, %v9084
  %v9086 = vpop.f32.mrf.mxu0
  %9087 = vmatprep.mubr.f32.mxu0 0.0
  %9088 = vmatmul.mubr.f32.gmra.mxu0 %v8870
  %v9089 = vpop.f32.mrf.mxu0
  %v9090 = vadd.f32 0.0, %v9089
  %v9091 = vpop.f32.mrf.mxu0
  %9092 = vmatprep.mubr.f32.mxu0 0.0
  %9093 = vmatmul.mubr.f32.gmra.mxu0 %v8873
  %v9094 = vpop.f32.mrf.mxu0
  %v9095 = vadd.f32 0.0, %v9094
  %v9096 = vpop.f32.mrf.mxu0
  %9097 = vmatprep.mubr.f32.mxu0 0.0
  %9098 = vmatmul.mubr.f32.gmra.mxu0 %v8876
  %v9099 = vpop.f32.mrf.mxu0
  %v9100 = vadd.f32 0.0, %v9099
  %v9101 = vpop.f32.mrf.mxu0
  %9102 = vmatprep.mubr.f32.mxu0 0.0
  %9103 = vmatmul.mubr.f32.gmra.mxu0 %v8879
  %v9104 = vpop.f32.mrf.mxu0
  %v9105 = vadd.f32 0.0, %v9104
  %v9106 = vpop.f32.mrf.mxu0
  %9107 = vmatprep.mubr.f32.mxu0 0.0
  %9108 = vmatmul.mubr.f32.gmra.mxu0 %v8882
  %v9109 = vpop.f32.mrf.mxu0
  %v9110 = vadd.f32 0.0, %v9109
  %v9111 = vpop.f32.mrf.mxu0
  %9112 = vmatprep.mubr.f32.mxu0 0.0
  %9113 = vmatmul.mubr.f32.gmra.mxu0 %v8885
  %v9114 = vpop.f32.mrf.mxu0
  %v9115 = vadd.f32 0.0, %v9114
  %v9116 = vpop.f32.mrf.mxu0
  %9117 = vmatprep.mubr.f32.mxu0 0.0
  %9118 = vmatmul.mubr.f32.gmra.mxu0 %v8888
  %v9119 = vpop.f32.mrf.mxu0
  %v9120 = vadd.f32 0.0, %v9119
  %v9121 = vpop.f32.mrf.mxu0
  %9122 = vmatprep.mubr.f32.mxu0 0.0
  %9123 = vmatmul.mubr.f32.gmra.mxu0 %v8891
  %v9124 = vpop.f32.mrf.mxu0
  %v9125 = vadd.f32 0.0, %v9124
  %v9126 = vpop.f32.mrf.mxu0
  %9127 = vmatprep.mubr.f32.mxu0 0.0
  %9128 = vmatmul.mubr.f32.gmra.mxu0 %v8894
  %v9129 = vpop.f32.mrf.mxu0
  %v9130 = vadd.f32 0.0, %v9129
  %v9131 = vpop.f32.mrf.mxu0
  %9132 = vmatprep.mubr.f32.mxu0 0.0
  %9133 = vmatmul.mubr.f32.gmra.mxu0 %v8897
  %v9134 = vpop.f32.mrf.mxu0
  %v9135 = vadd.f32 0.0, %v9134
  %v9136 = vpop.f32.mrf.mxu0
  %9137 = vmatprep.mubr.f32.mxu0 0.0
  %9138 = vmatmul.mubr.f32.gmra.mxu0 %v8900
  %v9139 = vpop.f32.mrf.mxu0
  %v9140 = vadd.f32 0.0, %v9139
  %v9141 = vpop.f32.mrf.mxu0
  %9142 = vmatprep.mubr.f32.mxu0 0.0
  %9143 = vmatmul.mubr.f32.gmra.mxu0 %v8903
  %v9144 = vpop.f32.mrf.mxu0
  %v9145 = vadd.f32 0.0, %v9144
  %v9146 = vpop.f32.mrf.mxu0
  %9147 = vmatprep.mubr.f32.mxu0 0.0
  %9148 = vmatmul.mubr.f32.gmra.mxu0 %v8906
  %v9149 = vpop.f32.mrf.mxu0
  %v9150 = vadd.f32 0.0, %v9149
  %v9151 = vpop.f32.mrf.mxu0
  %9152 = vdwg.mxu0
  %v9153 = vadd.f32 %v8055, %v8975
  %v9154 = vadd.f32 %v8056, %v8980
  %v9155 = vadd.f32 %v8057, %v8985
  %v9156 = vadd.f32 %v8058, %v8990
  %v9157 = vadd.f32 %v8059, %v8995
  %v9158 = vadd.f32 %v8060, %v9000
  %v9159 = vadd.f32 %v8061, %v9005
  %v9160 = vadd.f32 %v8062, %v9010
  %v9161 = vadd.f32 %v8063, %v9015
  %v9162 = vadd.f32 %v8064, %v9020
  %v9163 = vadd.f32 %v8065, %v9025
  %v9164 = vadd.f32 %v8066, %v9030
  %v9165 = vadd.f32 %v8067, %v9035
  %v9166 = vadd.f32 %v8068, %v9040
  %v9167 = vadd.f32 %v8069, %v9045
  %v9168 = vadd.f32 %v8070, %v9050
  %v9169 = vadd.f32 %v8071, %v9055
  %v9170 = vadd.f32 %v8072, %v9060
  %v9171 = vadd.f32 %v8073, %v9065
  %v9172 = vadd.f32 %v8074, %v9070
  %v9173 = vadd.f32 %v8075, %v9075
  %v9174 = vadd.f32 %v8076, %v9080
  %v9175 = vadd.f32 %v8077, %v9085
  %v9176 = vadd.f32 %v8078, %v9090
  %v9177 = vadd.f32 %v8079, %v9095
  %v9178 = vadd.f32 %v8080, %v9100
  %v9179 = vadd.f32 %v8081, %v9105
  %v9180 = vadd.f32 %v8082, %v9110
  %v9181 = vadd.f32 %v8083, %v9115
  %v9182 = vadd.f32 %v8084, %v9120
  %v9183 = vadd.f32 %v8085, %v9125
  %v9184 = vadd.f32 %v8086, %v9130
  %v9185 = vadd.f32 %v8087, %v9135
  %v9186 = vadd.f32 %v8088, %v9140
  %v9187 = vadd.f32 %v8089, %v9145
  %v9188 = vadd.f32 %v8090, %v9150
  %s9189 = scalar_lea.vmem %s3, 6912
  %v9190 = vld [vmem:[%s9189] sm:$0xff]
  %v9191 = vld [vmem:[%s9189 + $0x8] sm:$0xff]
  %v9192 = vld [vmem:[%s9189 + $0x10] sm:$0xff]
  %v9193 = vld [vmem:[%s9189 + $0x18] sm:$0xff]
  %v9194 = vld [vmem:[%s9189 + $0x20] sm:$0xff]
  %v9195 = vld [vmem:[%s9189 + $0x28] sm:$0xff]
  %v9196 = vld [vmem:[%s9189 + $0x30] sm:$0xff]
  %v9197 = vld [vmem:[%s9189 + $0x38] sm:$0xff]
  %v9198 = vld [vmem:[%s9189 + $0x40] sm:$0xff]
  %v9199 = vld [vmem:[%s9189 + $0x48] sm:$0xff]
  %v9200 = vld [vmem:[%s9189 + $0x50] sm:$0xff]
  %v9201 = vld [vmem:[%s9189 + $0x58] sm:$0xff]
  %v9202 = vld [vmem:[%s9189 + $0x60] sm:$0xff]
  %v9203 = vld [vmem:[%s9189 + $0x68] sm:$0xff]
  %v9204 = vld [vmem:[%s9189 + $0x70] sm:$0xff]
  %v9205 = vld [vmem:[%s9189 + $0x78] sm:$0xff]
  %v9206 = vld [vmem:[%s9189 + $0x80] sm:$0xff]
  %v9207 = vld [vmem:[%s9189 + $0x88] sm:$0xff]
  %v9208 = vld [vmem:[%s9189 + $0x90] sm:$0xff]
  %v9209 = vld [vmem:[%s9189 + $0x98] sm:$0xff]
  %v9210 = vld [vmem:[%s9189 + $0xa0] sm:$0xff]
  %v9211 = vld [vmem:[%s9189 + $0xa8] sm:$0xff]
  %v9212 = vld [vmem:[%s9189 + $0xb0] sm:$0xff]
  %v9213 = vld [vmem:[%s9189 + $0xb8] sm:$0xff]
  %v9214 = vld [vmem:[%s9189 + $0xc0] sm:$0xff]
  %v9215 = vld [vmem:[%s9189 + $0xc8] sm:$0xff]
  %v9216 = vld [vmem:[%s9189 + $0xd0] sm:$0xff]
  %v9217 = vld [vmem:[%s9189 + $0xd8] sm:$0xff]
  %v9218 = vld [vmem:[%s9189 + $0xe0] sm:$0xff]
  %v9219 = vld [vmem:[%s9189 + $0xe8] sm:$0xff]
  %v9220 = vld [vmem:[%s9189 + $0xf0] sm:$0xff]
  %v9221 = vld [vmem:[%s9189 + $0xf8] sm:$0xff]
  %v9222 = vld [vmem:[%s9189 + $0x100] sm:$0xff]
  %v9223 = vld [vmem:[%s9189 + $0x108] sm:$0xff]
  %v9224 = vld [vmem:[%s9189 + $0x110] sm:$0xff]
  %v9225 = vld [vmem:[%s9189 + $0x118] sm:$0xff]
  %v9226 = vld [vmem:[%s9189 + $0x120] sm:$0xff]
  %v9227 = vld [vmem:[%s9189 + $0x128] sm:$0xff]
  %v9228 = vld [vmem:[%s9189 + $0x130] sm:$0xff]
  %v9229 = vld [vmem:[%s9189 + $0x138] sm:$0xff]
  %v9230 = vld [vmem:[%s9189 + $0x140] sm:$0xff]
  %v9231 = vld [vmem:[%s9189 + $0x148] sm:$0xff]
  %v9232 = vld [vmem:[%s9189 + $0x150] sm:$0xff]
  %v9233 = vld [vmem:[%s9189 + $0x158] sm:$0xff]
  %v9234 = vld [vmem:[%s9189 + $0x160] sm:$0xff]
  %v9235 = vld [vmem:[%s9189 + $0x168] sm:$0xff]
  %v9236 = vld [vmem:[%s9189 + $0x170] sm:$0xff]
  %v9237 = vld [vmem:[%s9189 + $0x178] sm:$0xff]
  %v9238 = vld [vmem:[%s9189 + $0x180] sm:$0xff]
  %v9239 = vld [vmem:[%s9189 + $0x188] sm:$0xff]
  %v9240 = vld [vmem:[%s9189 + $0x190] sm:$0xff]
  %v9241 = vld [vmem:[%s9189 + $0x198] sm:$0xff]
  %v9242 = vld [vmem:[%s9189 + $0x1a0] sm:$0xff]
  %v9243 = vld [vmem:[%s9189 + $0x1a8] sm:$0xff]
  %v9244 = vld [vmem:[%s9189 + $0x1b0] sm:$0xff]
  %v9245 = vld [vmem:[%s9189 + $0x1b8] sm:$0xff]
  %v9246 = vld [vmem:[%s9189 + $0x1c0] sm:$0xff]
  %v9247 = vld [vmem:[%s9189 + $0x1c8] sm:$0xff]
  %v9248 = vld [vmem:[%s9189 + $0x1d0] sm:$0xff]
  %v9249 = vld [vmem:[%s9189 + $0x1d8] sm:$0xff]
  %v9250 = vld [vmem:[%s9189 + $0x1e0] sm:$0xff]
  %v9251 = vld [vmem:[%s9189 + $0x1e8] sm:$0xff]
  %v9252 = vld [vmem:[%s9189 + $0x1f0] sm:$0xff]
  %v9253 = vld [vmem:[%s9189 + $0x1f8] sm:$0xff]
  %v9254 = vld [vmem:[%s9189 + $0x200] sm:$0xff]
  %v9255 = vld [vmem:[%s9189 + $0x208] sm:$0xff]
  %v9256 = vld [vmem:[%s9189 + $0x210] sm:$0xff]
  %v9257 = vld [vmem:[%s9189 + $0x218] sm:$0xff]
  %v9258 = vld [vmem:[%s9189 + $0x220] sm:$0xff]
  %v9259 = vld [vmem:[%s9189 + $0x228] sm:$0xff]
  %v9260 = vld [vmem:[%s9189 + $0x230] sm:$0xff]
  %v9261 = vld [vmem:[%s9189 + $0x238] sm:$0xff]
  %v9262 = vld [vmem:[%s9189 + $0x240] sm:$0xff]
  %v9263 = vld [vmem:[%s9189 + $0x248] sm:$0xff]
  %v9264 = vld [vmem:[%s9189 + $0x250] sm:$0xff]
  %v9265 = vld [vmem:[%s9189 + $0x258] sm:$0xff]
  %v9266 = vld [vmem:[%s9189 + $0x260] sm:$0xff]
  %v9267 = vld [vmem:[%s9189 + $0x268] sm:$0xff]
  %v9268 = vld [vmem:[%s9189 + $0x270] sm:$0xff]
  %v9269 = vld [vmem:[%s9189 + $0x278] sm:$0xff]
  %v9270 = vld [vmem:[%s9189 + $0x280] sm:$0xff]
  %v9271 = vld [vmem:[%s9189 + $0x288] sm:$0xff]
  %v9272 = vld [vmem:[%s9189 + $0x290] sm:$0xff]
  %v9273 = vld [vmem:[%s9189 + $0x298] sm:$0xff]
  %v9274 = vld [vmem:[%s9189 + $0x2a0] sm:$0xff]
  %v9275 = vld [vmem:[%s9189 + $0x2a8] sm:$0xff]
  %v9276 = vld [vmem:[%s9189 + $0x2b0] sm:$0xff]
  %v9277 = vld [vmem:[%s9189 + $0x2b8] sm:$0xff]
  %v9278 = vld [vmem:[%s9189 + $0x2c0] sm:$0xff]
  %v9279 = vld [vmem:[%s9189 + $0x2c8] sm:$0xff]
  %v9280 = vld [vmem:[%s9189 + $0x2d0] sm:$0xff]
  %v9281 = vld [vmem:[%s9189 + $0x2d8] sm:$0xff]
  %v9282 = vld [vmem:[%s9189 + $0x2e0] sm:$0xff]
  %v9283 = vld [vmem:[%s9189 + $0x2e8] sm:$0xff]
  %v9284 = vld [vmem:[%s9189 + $0x2f0] sm:$0xff]
  %v9285 = vld [vmem:[%s9189 + $0x2f8] sm:$0xff]
  %v9286 = vld [vmem:[%s9189 + $0x300] sm:$0xff]
  %v9287 = vld [vmem:[%s9189 + $0x308] sm:$0xff]
  %v9288 = vld [vmem:[%s9189 + $0x310] sm:$0xff]
  %v9289 = vld [vmem:[%s9189 + $0x318] sm:$0xff]
  %v9290 = vld [vmem:[%s9189 + $0x320] sm:$0xff]
  %v9291 = vld [vmem:[%s9189 + $0x328] sm:$0xff]
  %v9292 = vld [vmem:[%s9189 + $0x330] sm:$0xff]
  %v9293 = vld [vmem:[%s9189 + $0x338] sm:$0xff]
  %v9294 = vld [vmem:[%s9189 + $0x340] sm:$0xff]
  %v9295 = vld [vmem:[%s9189 + $0x348] sm:$0xff]
  %v9296 = vld [vmem:[%s9189 + $0x350] sm:$0xff]
  %v9297 = vld [vmem:[%s9189 + $0x358] sm:$0xff]
  %v9299 = vsel %vm88, %v9192, 0
  %v9302 = vsel %vm88, %v9195, 0
  %v9305 = vsel %vm88, %v9198, 0
  %v9308 = vsel %vm88, %v9201, 0
  %v9311 = vsel %vm88, %v9204, 0
  %v9314 = vsel %vm88, %v9207, 0
  %v9317 = vsel %vm88, %v9210, 0
  %v9320 = vsel %vm88, %v9213, 0
  %v9323 = vsel %vm88, %v9216, 0
  %v9326 = vsel %vm88, %v9219, 0
  %v9329 = vsel %vm88, %v9222, 0
  %v9332 = vsel %vm88, %v9225, 0
  %v9335 = vsel %vm88, %v9228, 0
  %v9338 = vsel %vm88, %v9231, 0
  %v9341 = vsel %vm88, %v9234, 0
  %v9344 = vsel %vm88, %v9237, 0
  %v9347 = vsel %vm88, %v9240, 0
  %v9350 = vsel %vm88, %v9243, 0
  %v9353 = vsel %vm88, %v9246, 0
  %v9356 = vsel %vm88, %v9249, 0
  %v9359 = vsel %vm88, %v9252, 0
  %v9362 = vsel %vm88, %v9255, 0
  %v9365 = vsel %vm88, %v9258, 0
  %v9368 = vsel %vm88, %v9261, 0
  %v9371 = vsel %vm88, %v9264, 0
  %v9374 = vsel %vm88, %v9267, 0
  %v9377 = vsel %vm88, %v9270, 0
  %v9380 = vsel %vm88, %v9273, 0
  %v9383 = vsel %vm88, %v9276, 0
  %v9386 = vsel %vm88, %v9279, 0
  %v9389 = vsel %vm88, %v9282, 0
  %v9392 = vsel %vm88, %v9285, 0
  %v9395 = vsel %vm88, %v9288, 0
  %v9398 = vsel %vm88, %v9291, 0
  %v9401 = vsel %vm88, %v9294, 0
  %v9404 = vsel %vm88, %v9297, 0
  %9406 = vmatprep.subr.mxu0 0.0
  %9407 = vmatpush1.msra.mxu0 %v457
  %9408 = vmatprep.subr.mxu0 0.0
  %9409 = vmatpush1.msra.mxu0 %v456
  %9410 = vmatprep.subr.mxu0 0.0
  %9411 = vmatpush1.msra.mxu0 %v455
  %9412 = vmatprep.subr.mxu0 0.0
  %9413 = vmatpush1.msra.mxu0 %v454
  %9414 = vmatprep.subr.mxu0 0.0
  %9415 = vmatpush1.msra.mxu0 %v453
  %9416 = vmatprep.subr.mxu0 0.0
  %9417 = vmatpush1.msra.mxu0 %v452
  %9418 = vmatprep.subr.mxu0 0.0
  %9419 = vmatpush1.msra.mxu0 %v451
  %9420 = vmatprep.subr.mxu0 0.0
  %9421 = vmatpush1.msra.mxu0 %v450
  %9422 = vmatprep.subr.mxu0 0.0
  %9423 = vmatpush1.msra.mxu0 %v449
  %9424 = vmatprep.subr.mxu0 0.0
  %9425 = vmatpush1.msra.mxu0 %v448
  %9426 = vmatprep.subr.mxu0 0.0
  %9427 = vmatpush1.msra.mxu0 %v447
  %9428 = vmatprep.subr.mxu0 0.0
  %9429 = vmatpush1.msra.mxu0 %v446
  %9430 = vmatprep.subr.mxu0 0.0
  %9431 = vmatpush1.msra.mxu0 %v445
  %9432 = vmatprep.subr.mxu0 0.0
  %9433 = vmatpush1.msra.mxu0 %v444
  %9434 = vmatprep.subr.mxu0 0.0
  %9435 = vmatpush1.msra.mxu0 %v443
  %9436 = vmatprep.subr.mxu0 0.0
  %9437 = vmatpush1.msra.mxu0 %v442
  %9438 = vmatprep.subr.mxu0 0.0
  %9439 = vmatpush2.msra.mxu0 %v473
  %9440 = vmatprep.subr.mxu0 0.0
  %9441 = vmatpush2.msra.mxu0 %v472
  %9442 = vmatprep.subr.mxu0 0.0
  %9443 = vmatpush2.msra.mxu0 %v471
  %9444 = vmatprep.subr.mxu0 0.0
  %9445 = vmatpush2.msra.mxu0 %v470
  %9446 = vmatprep.subr.mxu0 0.0
  %9447 = vmatpush2.msra.mxu0 %v469
  %9448 = vmatprep.subr.mxu0 0.0
  %9449 = vmatpush2.msra.mxu0 %v468
  %9450 = vmatprep.subr.mxu0 0.0
  %9451 = vmatpush2.msra.mxu0 %v467
  %9452 = vmatprep.subr.mxu0 0.0
  %9453 = vmatpush2.msra.mxu0 %v466
  %9454 = vmatprep.subr.mxu0 0.0
  %9455 = vmatpush2.msra.mxu0 %v465
  %9456 = vmatprep.subr.mxu0 0.0
  %9457 = vmatpush2.msra.mxu0 %v464
  %9458 = vmatprep.subr.mxu0 0.0
  %9459 = vmatpush2.msra.mxu0 %v463
  %9460 = vmatprep.subr.mxu0 0.0
  %9461 = vmatpush2.msra.mxu0 %v462
  %9462 = vmatprep.subr.mxu0 0.0
  %9463 = vmatpush2.msra.mxu0 %v461
  %9464 = vmatprep.subr.mxu0 0.0
  %9465 = vmatpush2.msra.mxu0 %v460
  %9466 = vmatprep.subr.mxu0 0.0
  %9467 = vmatpush2.msra.mxu0 %v459
  %9468 = vmatprep.subr.mxu0 0.0
  %9469 = vmatpush2.msra.mxu0 %v458
  %9470 = vmatprep.mubr.f32.mxu0 %v9191
  %9471 = vmatmul.mubr.f32.gmra.mxu0 %v9190
  %v9472 = vpop.f32.mrf.mxu0
  %v9473 = vadd.f32 0.0, %v9472
  %v9474 = vpop.f32.mrf.mxu0
  %9475 = vmatprep.mubr.f32.mxu0 %v9194
  %9476 = vmatmul.mubr.f32.gmra.mxu0 %v9193
  %v9477 = vpop.f32.mrf.mxu0
  %v9478 = vadd.f32 0.0, %v9477
  %v9479 = vpop.f32.mrf.mxu0
  %9480 = vmatprep.mubr.f32.mxu0 %v9197
  %9481 = vmatmul.mubr.f32.gmra.mxu0 %v9196
  %v9482 = vpop.f32.mrf.mxu0
  %v9483 = vadd.f32 0.0, %v9482
  %v9484 = vpop.f32.mrf.mxu0
  %9485 = vmatprep.mubr.f32.mxu0 %v9200
  %9486 = vmatmul.mubr.f32.gmra.mxu0 %v9199
  %v9487 = vpop.f32.mrf.mxu0
  %v9488 = vadd.f32 0.0, %v9487
  %v9489 = vpop.f32.mrf.mxu0
  %9490 = vmatprep.mubr.f32.mxu0 %v9203
  %9491 = vmatmul.mubr.f32.gmra.mxu0 %v9202
  %v9492 = vpop.f32.mrf.mxu0
  %v9493 = vadd.f32 0.0, %v9492
  %v9494 = vpop.f32.mrf.mxu0
  %9495 = vmatprep.mubr.f32.mxu0 %v9206
  %9496 = vmatmul.mubr.f32.gmra.mxu0 %v9205
  %v9497 = vpop.f32.mrf.mxu0
  %v9498 = vadd.f32 0.0, %v9497
  %v9499 = vpop.f32.mrf.mxu0
  %9500 = vmatprep.mubr.f32.mxu0 %v9209
  %9501 = vmatmul.mubr.f32.gmra.mxu0 %v9208
  %v9502 = vpop.f32.mrf.mxu0
  %v9503 = vadd.f32 0.0, %v9502
  %v9504 = vpop.f32.mrf.mxu0
  %9505 = vmatprep.mubr.f32.mxu0 %v9212
  %9506 = vmatmul.mubr.f32.gmra.mxu0 %v9211
  %v9507 = vpop.f32.mrf.mxu0
  %v9508 = vadd.f32 0.0, %v9507
  %v9509 = vpop.f32.mrf.mxu0
  %9510 = vmatprep.mubr.f32.mxu0 %v9215
  %9511 = vmatmul.mubr.f32.gmra.mxu0 %v9214
  %v9512 = vpop.f32.mrf.mxu0
  %v9513 = vadd.f32 0.0, %v9512
  %v9514 = vpop.f32.mrf.mxu0
  %9515 = vmatprep.mubr.f32.mxu0 %v9218
  %9516 = vmatmul.mubr.f32.gmra.mxu0 %v9217
  %v9517 = vpop.f32.mrf.mxu0
  %v9518 = vadd.f32 0.0, %v9517
  %v9519 = vpop.f32.mrf.mxu0
  %9520 = vmatprep.mubr.f32.mxu0 %v9221
  %9521 = vmatmul.mubr.f32.gmra.mxu0 %v9220
  %v9522 = vpop.f32.mrf.mxu0
  %v9523 = vadd.f32 0.0, %v9522
  %v9524 = vpop.f32.mrf.mxu0
  %9525 = vmatprep.mubr.f32.mxu0 %v9224
  %9526 = vmatmul.mubr.f32.gmra.mxu0 %v9223
  %v9527 = vpop.f32.mrf.mxu0
  %v9528 = vadd.f32 0.0, %v9527
  %v9529 = vpop.f32.mrf.mxu0
  %9530 = vmatprep.mubr.f32.mxu0 %v9227
  %9531 = vmatmul.mubr.f32.gmra.mxu0 %v9226
  %v9532 = vpop.f32.mrf.mxu0
  %v9533 = vadd.f32 0.0, %v9532
  %v9534 = vpop.f32.mrf.mxu0
  %9535 = vmatprep.mubr.f32.mxu0 %v9230
  %9536 = vmatmul.mubr.f32.gmra.mxu0 %v9229
  %v9537 = vpop.f32.mrf.mxu0
  %v9538 = vadd.f32 0.0, %v9537
  %v9539 = vpop.f32.mrf.mxu0
  %9540 = vmatprep.mubr.f32.mxu0 %v9233
  %9541 = vmatmul.mubr.f32.gmra.mxu0 %v9232
  %v9542 = vpop.f32.mrf.mxu0
  %v9543 = vadd.f32 0.0, %v9542
  %v9544 = vpop.f32.mrf.mxu0
  %9545 = vmatprep.mubr.f32.mxu0 %v9236
  %9546 = vmatmul.mubr.f32.gmra.mxu0 %v9235
  %v9547 = vpop.f32.mrf.mxu0
  %v9548 = vadd.f32 0.0, %v9547
  %v9549 = vpop.f32.mrf.mxu0
  %9550 = vmatprep.mubr.f32.mxu0 %v9239
  %9551 = vmatmul.mubr.f32.gmra.mxu0 %v9238
  %v9552 = vpop.f32.mrf.mxu0
  %v9553 = vadd.f32 0.0, %v9552
  %v9554 = vpop.f32.mrf.mxu0
  %9555 = vmatprep.mubr.f32.mxu0 %v9242
  %9556 = vmatmul.mubr.f32.gmra.mxu0 %v9241
  %v9557 = vpop.f32.mrf.mxu0
  %v9558 = vadd.f32 0.0, %v9557
  %v9559 = vpop.f32.mrf.mxu0
  %9560 = vmatprep.mubr.f32.mxu0 %v9245
  %9561 = vmatmul.mubr.f32.gmra.mxu0 %v9244
  %v9562 = vpop.f32.mrf.mxu0
  %v9563 = vadd.f32 0.0, %v9562
  %v9564 = vpop.f32.mrf.mxu0
  %9565 = vmatprep.mubr.f32.mxu0 %v9248
  %9566 = vmatmul.mubr.f32.gmra.mxu0 %v9247
  %v9567 = vpop.f32.mrf.mxu0
  %v9568 = vadd.f32 0.0, %v9567
  %v9569 = vpop.f32.mrf.mxu0
  %9570 = vmatprep.mubr.f32.mxu0 %v9251
  %9571 = vmatmul.mubr.f32.gmra.mxu0 %v9250
  %v9572 = vpop.f32.mrf.mxu0
  %v9573 = vadd.f32 0.0, %v9572
  %v9574 = vpop.f32.mrf.mxu0
  %9575 = vmatprep.mubr.f32.mxu0 %v9254
  %9576 = vmatmul.mubr.f32.gmra.mxu0 %v9253
  %v9577 = vpop.f32.mrf.mxu0
  %v9578 = vadd.f32 0.0, %v9577
  %v9579 = vpop.f32.mrf.mxu0
  %9580 = vmatprep.mubr.f32.mxu0 %v9257
  %9581 = vmatmul.mubr.f32.gmra.mxu0 %v9256
  %v9582 = vpop.f32.mrf.mxu0
  %v9583 = vadd.f32 0.0, %v9582
  %v9584 = vpop.f32.mrf.mxu0
  %9585 = vmatprep.mubr.f32.mxu0 %v9260
  %9586 = vmatmul.mubr.f32.gmra.mxu0 %v9259
  %v9587 = vpop.f32.mrf.mxu0
  %v9588 = vadd.f32 0.0, %v9587
  %v9589 = vpop.f32.mrf.mxu0
  %9590 = vmatprep.mubr.f32.mxu0 %v9263
  %9591 = vmatmul.mubr.f32.gmra.mxu0 %v9262
  %v9592 = vpop.f32.mrf.mxu0
  %v9593 = vadd.f32 0.0, %v9592
  %v9594 = vpop.f32.mrf.mxu0
  %9595 = vmatprep.mubr.f32.mxu0 %v9266
  %9596 = vmatmul.mubr.f32.gmra.mxu0 %v9265
  %v9597 = vpop.f32.mrf.mxu0
  %v9598 = vadd.f32 0.0, %v9597
  %v9599 = vpop.f32.mrf.mxu0
  %9600 = vmatprep.mubr.f32.mxu0 %v9269
  %9601 = vmatmul.mubr.f32.gmra.mxu0 %v9268
  %v9602 = vpop.f32.mrf.mxu0
  %v9603 = vadd.f32 0.0, %v9602
  %v9604 = vpop.f32.mrf.mxu0
  %9605 = vmatprep.mubr.f32.mxu0 %v9272
  %9606 = vmatmul.mubr.f32.gmra.mxu0 %v9271
  %v9607 = vpop.f32.mrf.mxu0
  %v9608 = vadd.f32 0.0, %v9607
  %v9609 = vpop.f32.mrf.mxu0
  %9610 = vmatprep.mubr.f32.mxu0 %v9275
  %9611 = vmatmul.mubr.f32.gmra.mxu0 %v9274
  %v9612 = vpop.f32.mrf.mxu0
  %v9613 = vadd.f32 0.0, %v9612
  %v9614 = vpop.f32.mrf.mxu0
  %9615 = vmatprep.mubr.f32.mxu0 %v9278
  %9616 = vmatmul.mubr.f32.gmra.mxu0 %v9277
  %v9617 = vpop.f32.mrf.mxu0
  %v9618 = vadd.f32 0.0, %v9617
  %v9619 = vpop.f32.mrf.mxu0
  %9620 = vmatprep.mubr.f32.mxu0 %v9281
  %9621 = vmatmul.mubr.f32.gmra.mxu0 %v9280
  %v9622 = vpop.f32.mrf.mxu0
  %v9623 = vadd.f32 0.0, %v9622
  %v9624 = vpop.f32.mrf.mxu0
  %9625 = vmatprep.mubr.f32.mxu0 %v9284
  %9626 = vmatmul.mubr.f32.gmra.mxu0 %v9283
  %v9627 = vpop.f32.mrf.mxu0
  %v9628 = vadd.f32 0.0, %v9627
  %v9629 = vpop.f32.mrf.mxu0
  %9630 = vmatprep.mubr.f32.mxu0 %v9287
  %9631 = vmatmul.mubr.f32.gmra.mxu0 %v9286
  %v9632 = vpop.f32.mrf.mxu0
  %v9633 = vadd.f32 0.0, %v9632
  %v9634 = vpop.f32.mrf.mxu0
  %9635 = vmatprep.mubr.f32.mxu0 %v9290
  %9636 = vmatmul.mubr.f32.gmra.mxu0 %v9289
  %v9637 = vpop.f32.mrf.mxu0
  %v9638 = vadd.f32 0.0, %v9637
  %v9639 = vpop.f32.mrf.mxu0
  %9640 = vmatprep.mubr.f32.mxu0 %v9293
  %9641 = vmatmul.mubr.f32.gmra.mxu0 %v9292
  %v9642 = vpop.f32.mrf.mxu0
  %v9643 = vadd.f32 0.0, %v9642
  %v9644 = vpop.f32.mrf.mxu0
  %9645 = vmatprep.mubr.f32.mxu0 %v9296
  %9646 = vmatmul.mubr.f32.gmra.mxu0 %v9295
  %v9647 = vpop.f32.mrf.mxu0
  %v9648 = vadd.f32 0.0, %v9647
  %v9649 = vpop.f32.mrf.mxu0
  %9650 = vdwg.mxu0
  %9651 = vmatprep.subr.mxu0 0.0
  %9652 = vmatpush1.msra.mxu0 0.0
  %9653 = vmatprep.subr.mxu0 0.0
  %9654 = vmatpush1.msra.mxu0 0.0
  %9655 = vmatprep.subr.mxu0 0.0
  %9656 = vmatpush1.msra.mxu0 0.0
  %9657 = vmatprep.subr.mxu0 0.0
  %9658 = vmatpush1.msra.mxu0 0.0
  %9659 = vmatprep.subr.mxu0 0.0
  %9660 = vmatpush1.msra.mxu0 0.0
  %9661 = vmatprep.subr.mxu0 0.0
  %9662 = vmatpush1.msra.mxu0 0.0
  %9663 = vmatprep.subr.mxu0 0.0
  %9664 = vmatpush1.msra.mxu0 0.0
  %9665 = vmatprep.subr.mxu0 0.0
  %9666 = vmatpush1.msra.mxu0 0.0
  %9667 = vmatprep.subr.mxu0 0.0
  %9668 = vmatpush1.msra.mxu0 0.0
  %9669 = vmatprep.subr.mxu0 0.0
  %9670 = vmatpush1.msra.mxu0 0.0
  %9671 = vmatprep.subr.mxu0 0.0
  %9672 = vmatpush1.msra.mxu0 0.0
  %9673 = vmatprep.subr.mxu0 0.0
  %9674 = vmatpush1.msra.mxu0 0.0
  %9675 = vmatprep.subr.mxu0 0.0
  %9676 = vmatpush1.msra.mxu0 %v477
  %9677 = vmatprep.subr.mxu0 0.0
  %9678 = vmatpush1.msra.mxu0 %v476
  %9679 = vmatprep.subr.mxu0 0.0
  %9680 = vmatpush1.msra.mxu0 %v475
  %9681 = vmatprep.subr.mxu0 0.0
  %9682 = vmatpush1.msra.mxu0 %v474
  %9683 = vmatprep.subr.mxu0 0.0
  %9684 = vmatpush2.msra.mxu0 0.0
  %9685 = vmatprep.subr.mxu0 0.0
  %9686 = vmatpush2.msra.mxu0 0.0
  %9687 = vmatprep.subr.mxu0 0.0
  %9688 = vmatpush2.msra.mxu0 0.0
  %9689 = vmatprep.subr.mxu0 0.0
  %9690 = vmatpush2.msra.mxu0 0.0
  %9691 = vmatprep.subr.mxu0 0.0
  %9692 = vmatpush2.msra.mxu0 0.0
  %9693 = vmatprep.subr.mxu0 0.0
  %9694 = vmatpush2.msra.mxu0 0.0
  %9695 = vmatprep.subr.mxu0 0.0
  %9696 = vmatpush2.msra.mxu0 0.0
  %9697 = vmatprep.subr.mxu0 0.0
  %9698 = vmatpush2.msra.mxu0 0.0
  %9699 = vmatprep.subr.mxu0 0.0
  %9700 = vmatpush2.msra.mxu0 0.0
  %9701 = vmatprep.subr.mxu0 0.0
  %9702 = vmatpush2.msra.mxu0 0.0
  %9703 = vmatprep.subr.mxu0 0.0
  %9704 = vmatpush2.msra.mxu0 0.0
  %9705 = vmatprep.subr.mxu0 0.0
  %9706 = vmatpush2.msra.mxu0 0.0
  %9707 = vmatprep.subr.mxu0 0.0
  %9708 = vmatpush2.msra.mxu0 0.0
  %9709 = vmatprep.subr.mxu0 0.0
  %9710 = vmatpush2.msra.mxu0 0.0
  %9711 = vmatprep.subr.mxu0 0.0
  %9712 = vmatpush2.msra.mxu0 0.0
  %9713 = vmatprep.subr.mxu0 0.0
  %9714 = vmatpush2.msra.mxu0 0.0
  %9715 = vmatprep.mubr.f32.mxu0 0.0
  %9716 = vmatmul.mubr.f32.gmra.mxu0 %v9299
  %v9717 = vpop.f32.mrf.mxu0
  %v9718 = vadd.f32 %v9473, %v9717
  %v9719 = vpop.f32.mrf.mxu0
  %9720 = vmatprep.mubr.f32.mxu0 0.0
  %9721 = vmatmul.mubr.f32.gmra.mxu0 %v9302
  %v9722 = vpop.f32.mrf.mxu0
  %v9723 = vadd.f32 %v9478, %v9722
  %v9724 = vpop.f32.mrf.mxu0
  %9725 = vmatprep.mubr.f32.mxu0 0.0
  %9726 = vmatmul.mubr.f32.gmra.mxu0 %v9305
  %v9727 = vpop.f32.mrf.mxu0
  %v9728 = vadd.f32 %v9483, %v9727
  %v9729 = vpop.f32.mrf.mxu0
  %9730 = vmatprep.mubr.f32.mxu0 0.0
  %9731 = vmatmul.mubr.f32.gmra.mxu0 %v9308
  %v9732 = vpop.f32.mrf.mxu0
  %v9733 = vadd.f32 %v9488, %v9732
  %v9734 = vpop.f32.mrf.mxu0
  %9735 = vmatprep.mubr.f32.mxu0 0.0
  %9736 = vmatmul.mubr.f32.gmra.mxu0 %v9311
  %v9737 = vpop.f32.mrf.mxu0
  %v9738 = vadd.f32 %v9493, %v9737
  %v9739 = vpop.f32.mrf.mxu0
  %9740 = vmatprep.mubr.f32.mxu0 0.0
  %9741 = vmatmul.mubr.f32.gmra.mxu0 %v9314
  %v9742 = vpop.f32.mrf.mxu0
  %v9743 = vadd.f32 %v9498, %v9742
  %v9744 = vpop.f32.mrf.mxu0
  %9745 = vmatprep.mubr.f32.mxu0 0.0
  %9746 = vmatmul.mubr.f32.gmra.mxu0 %v9317
  %v9747 = vpop.f32.mrf.mxu0
  %v9748 = vadd.f32 %v9503, %v9747
  %v9749 = vpop.f32.mrf.mxu0
  %9750 = vmatprep.mubr.f32.mxu0 0.0
  %9751 = vmatmul.mubr.f32.gmra.mxu0 %v9320
  %v9752 = vpop.f32.mrf.mxu0
  %v9753 = vadd.f32 %v9508, %v9752
  %v9754 = vpop.f32.mrf.mxu0
  %9755 = vmatprep.mubr.f32.mxu0 0.0
  %9756 = vmatmul.mubr.f32.gmra.mxu0 %v9323
  %v9757 = vpop.f32.mrf.mxu0
  %v9758 = vadd.f32 %v9513, %v9757
  %v9759 = vpop.f32.mrf.mxu0
  %9760 = vmatprep.mubr.f32.mxu0 0.0
  %9761 = vmatmul.mubr.f32.gmra.mxu0 %v9326
  %v9762 = vpop.f32.mrf.mxu0
  %v9763 = vadd.f32 %v9518, %v9762
  %v9764 = vpop.f32.mrf.mxu0
  %9765 = vmatprep.mubr.f32.mxu0 0.0
  %9766 = vmatmul.mubr.f32.gmra.mxu0 %v9329
  %v9767 = vpop.f32.mrf.mxu0
  %v9768 = vadd.f32 %v9523, %v9767
  %v9769 = vpop.f32.mrf.mxu0
  %9770 = vmatprep.mubr.f32.mxu0 0.0
  %9771 = vmatmul.mubr.f32.gmra.mxu0 %v9332
  %v9772 = vpop.f32.mrf.mxu0
  %v9773 = vadd.f32 %v9528, %v9772
  %v9774 = vpop.f32.mrf.mxu0
  %9775 = vmatprep.mubr.f32.mxu0 0.0
  %9776 = vmatmul.mubr.f32.gmra.mxu0 %v9335
  %v9777 = vpop.f32.mrf.mxu0
  %v9778 = vadd.f32 %v9533, %v9777
  %v9779 = vpop.f32.mrf.mxu0
  %9780 = vmatprep.mubr.f32.mxu0 0.0
  %9781 = vmatmul.mubr.f32.gmra.mxu0 %v9338
  %v9782 = vpop.f32.mrf.mxu0
  %v9783 = vadd.f32 %v9538, %v9782
  %v9784 = vpop.f32.mrf.mxu0
  %9785 = vmatprep.mubr.f32.mxu0 0.0
  %9786 = vmatmul.mubr.f32.gmra.mxu0 %v9341
  %v9787 = vpop.f32.mrf.mxu0
  %v9788 = vadd.f32 %v9543, %v9787
  %v9789 = vpop.f32.mrf.mxu0
  %9790 = vmatprep.mubr.f32.mxu0 0.0
  %9791 = vmatmul.mubr.f32.gmra.mxu0 %v9344
  %v9792 = vpop.f32.mrf.mxu0
  %v9793 = vadd.f32 %v9548, %v9792
  %v9794 = vpop.f32.mrf.mxu0
  %9795 = vmatprep.mubr.f32.mxu0 0.0
  %9796 = vmatmul.mubr.f32.gmra.mxu0 %v9347
  %v9797 = vpop.f32.mrf.mxu0
  %v9798 = vadd.f32 %v9553, %v9797
  %v9799 = vpop.f32.mrf.mxu0
  %9800 = vmatprep.mubr.f32.mxu0 0.0
  %9801 = vmatmul.mubr.f32.gmra.mxu0 %v9350
  %v9802 = vpop.f32.mrf.mxu0
  %v9803 = vadd.f32 %v9558, %v9802
  %v9804 = vpop.f32.mrf.mxu0
  %9805 = vmatprep.mubr.f32.mxu0 0.0
  %9806 = vmatmul.mubr.f32.gmra.mxu0 %v9353
  %v9807 = vpop.f32.mrf.mxu0
  %v9808 = vadd.f32 %v9563, %v9807
  %v9809 = vpop.f32.mrf.mxu0
  %9810 = vmatprep.mubr.f32.mxu0 0.0
  %9811 = vmatmul.mubr.f32.gmra.mxu0 %v9356
  %v9812 = vpop.f32.mrf.mxu0
  %v9813 = vadd.f32 %v9568, %v9812
  %v9814 = vpop.f32.mrf.mxu0
  %9815 = vmatprep.mubr.f32.mxu0 0.0
  %9816 = vmatmul.mubr.f32.gmra.mxu0 %v9359
  %v9817 = vpop.f32.mrf.mxu0
  %v9818 = vadd.f32 %v9573, %v9817
  %v9819 = vpop.f32.mrf.mxu0
  %9820 = vmatprep.mubr.f32.mxu0 0.0
  %9821 = vmatmul.mubr.f32.gmra.mxu0 %v9362
  %v9822 = vpop.f32.mrf.mxu0
  %v9823 = vadd.f32 %v9578, %v9822
  %v9824 = vpop.f32.mrf.mxu0
  %9825 = vmatprep.mubr.f32.mxu0 0.0
  %9826 = vmatmul.mubr.f32.gmra.mxu0 %v9365
  %v9827 = vpop.f32.mrf.mxu0
  %v9828 = vadd.f32 %v9583, %v9827
  %v9829 = vpop.f32.mrf.mxu0
  %9830 = vmatprep.mubr.f32.mxu0 0.0
  %9831 = vmatmul.mubr.f32.gmra.mxu0 %v9368
  %v9832 = vpop.f32.mrf.mxu0
  %v9833 = vadd.f32 %v9588, %v9832
  %v9834 = vpop.f32.mrf.mxu0
  %9835 = vmatprep.mubr.f32.mxu0 0.0
  %9836 = vmatmul.mubr.f32.gmra.mxu0 %v9371
  %v9837 = vpop.f32.mrf.mxu0
  %v9838 = vadd.f32 %v9593, %v9837
  %v9839 = vpop.f32.mrf.mxu0
  %9840 = vmatprep.mubr.f32.mxu0 0.0
  %9841 = vmatmul.mubr.f32.gmra.mxu0 %v9374
  %v9842 = vpop.f32.mrf.mxu0
  %v9843 = vadd.f32 %v9598, %v9842
  %v9844 = vpop.f32.mrf.mxu0
  %9845 = vmatprep.mubr.f32.mxu0 0.0
  %9846 = vmatmul.mubr.f32.gmra.mxu0 %v9377
  %v9847 = vpop.f32.mrf.mxu0
  %v9848 = vadd.f32 %v9603, %v9847
  %v9849 = vpop.f32.mrf.mxu0
  %9850 = vmatprep.mubr.f32.mxu0 0.0
  %9851 = vmatmul.mubr.f32.gmra.mxu0 %v9380
  %v9852 = vpop.f32.mrf.mxu0
  %v9853 = vadd.f32 %v9608, %v9852
  %v9854 = vpop.f32.mrf.mxu0
  %9855 = vmatprep.mubr.f32.mxu0 0.0
  %9856 = vmatmul.mubr.f32.gmra.mxu0 %v9383
  %v9857 = vpop.f32.mrf.mxu0
  %v9858 = vadd.f32 %v9613, %v9857
  %v9859 = vpop.f32.mrf.mxu0
  %9860 = vmatprep.mubr.f32.mxu0 0.0
  %9861 = vmatmul.mubr.f32.gmra.mxu0 %v9386
  %v9862 = vpop.f32.mrf.mxu0
  %v9863 = vadd.f32 %v9618, %v9862
  %v9864 = vpop.f32.mrf.mxu0
  %9865 = vmatprep.mubr.f32.mxu0 0.0
  %9866 = vmatmul.mubr.f32.gmra.mxu0 %v9389
  %v9867 = vpop.f32.mrf.mxu0
  %v9868 = vadd.f32 %v9623, %v9867
  %v9869 = vpop.f32.mrf.mxu0
  %9870 = vmatprep.mubr.f32.mxu0 0.0
  %9871 = vmatmul.mubr.f32.gmra.mxu0 %v9392
  %v9872 = vpop.f32.mrf.mxu0
  %v9873 = vadd.f32 %v9628, %v9872
  %v9874 = vpop.f32.mrf.mxu0
  %9875 = vmatprep.mubr.f32.mxu0 0.0
  %9876 = vmatmul.mubr.f32.gmra.mxu0 %v9395
  %v9877 = vpop.f32.mrf.mxu0
  %v9878 = vadd.f32 %v9633, %v9877
  %v9879 = vpop.f32.mrf.mxu0
  %9880 = vmatprep.mubr.f32.mxu0 0.0
  %9881 = vmatmul.mubr.f32.gmra.mxu0 %v9398
  %v9882 = vpop.f32.mrf.mxu0
  %v9883 = vadd.f32 %v9638, %v9882
  %v9884 = vpop.f32.mrf.mxu0
  %9885 = vmatprep.mubr.f32.mxu0 0.0
  %9886 = vmatmul.mubr.f32.gmra.mxu0 %v9401
  %v9887 = vpop.f32.mrf.mxu0
  %v9888 = vadd.f32 %v9643, %v9887
  %v9889 = vpop.f32.mrf.mxu0
  %9890 = vmatprep.mubr.f32.mxu0 0.0
  %9891 = vmatmul.mubr.f32.gmra.mxu0 %v9404
  %v9892 = vpop.f32.mrf.mxu0
  %v9893 = vadd.f32 %v9648, %v9892
  %v9894 = vpop.f32.mrf.mxu0
  %9895 = vdwg.mxu0
  %s9896 = scalar_lea.vmem %s4, 64
  %v9897 = vld [vmem:[%s9896] sm:$0xff]
  %v9899 = vsel %vm1894, %v9718, 0
  %v9902 = vsel %vm1894, %v9723, 0
  %v9905 = vsel %vm1894, %v9728, 0
  %v9908 = vsel %vm1894, %v9733, 0
  %v9911 = vsel %vm1894, %v9738, 0
  %v9914 = vsel %vm1894, %v9743, 0
  %v9917 = vsel %vm1894, %v9748, 0
  %v9920 = vsel %vm1894, %v9753, 0
  %v9923 = vsel %vm1894, %v9758, 0
  %v9926 = vsel %vm1894, %v9763, 0
  %v9929 = vsel %vm1894, %v9768, 0
  %v9932 = vsel %vm1894, %v9773, 0
  %v9935 = vsel %vm1894, %v9778, 0
  %v9938 = vsel %vm1894, %v9783, 0
  %v9941 = vsel %vm1894, %v9788, 0
  %v9944 = vsel %vm1894, %v9793, 0
  %v9947 = vsel %vm1894, %v9798, 0
  %v9950 = vsel %vm1894, %v9803, 0
  %v9953 = vsel %vm1894, %v9808, 0
  %v9956 = vsel %vm1894, %v9813, 0
  %v9959 = vsel %vm1894, %v9818, 0
  %v9962 = vsel %vm1894, %v9823, 0
  %v9965 = vsel %vm1894, %v9828, 0
  %v9968 = vsel %vm1894, %v9833, 0
  %v9971 = vsel %vm1894, %v9838, 0
  %v9974 = vsel %vm1894, %v9843, 0
  %v9977 = vsel %vm1894, %v9848, 0
  %v9980 = vsel %vm1894, %v9853, 0
  %v9983 = vsel %vm1894, %v9858, 0
  %v9986 = vsel %vm1894, %v9863, 0
  %v9989 = vsel %vm1894, %v9868, 0
  %v9992 = vsel %vm1894, %v9873, 0
  %v9995 = vsel %vm1894, %v9878, 0
  %v9998 = vsel %vm1894, %v9883, 0
  %v10001 = vsel %vm1894, %v9888, 0
  %v10004 = vsel %vm1894, %v9893, 0
  %10006 = vmatprep.subr.mxu0 0.0
  %10007 = vmatpush1.msra.mxu0 0.0
  %10008 = vmatprep.subr.mxu0 0.0
  %10009 = vmatpush1.msra.mxu0 0.0
  %10010 = vmatprep.subr.mxu0 0.0
  %10011 = vmatpush1.msra.mxu0 0.0
  %10012 = vmatprep.subr.mxu0 0.0
  %10013 = vmatpush1.msra.mxu0 0.0
  %10014 = vmatprep.subr.mxu0 0.0
  %10015 = vmatpush1.msra.mxu0 0.0
  %10016 = vmatprep.subr.mxu0 0.0
  %10017 = vmatpush1.msra.mxu0 0.0
  %10018 = vmatprep.subr.mxu0 0.0
  %10019 = vmatpush1.msra.mxu0 0.0
  %10020 = vmatprep.subr.mxu0 0.0
  %10021 = vmatpush1.msra.mxu0 0.0
  %10022 = vmatprep.subr.mxu0 0.0
  %10023 = vmatpush1.msra.mxu0 0.0
  %10024 = vmatprep.subr.mxu0 0.0
  %10025 = vmatpush1.msra.mxu0 0.0
  %10026 = vmatprep.subr.mxu0 0.0
  %10027 = vmatpush1.msra.mxu0 0.0
  %10028 = vmatprep.subr.mxu0 0.0
  %10029 = vmatpush1.msra.mxu0 0.0
  %10030 = vmatprep.subr.mxu0 0.0
  %10031 = vmatpush1.msra.mxu0 0.0
  %10032 = vmatprep.subr.mxu0 0.0
  %10033 = vmatpush1.msra.mxu0 0.0
  %10034 = vmatprep.subr.mxu0 0.0
  %10035 = vmatpush1.msra.mxu0 0.0
  %10036 = vmatprep.subr.mxu0 0.0
  %10037 = vmatpush1.msra.mxu0 %v9897
  %10038 = vmatprep.subr.mxu0 0.0
  %10039 = vmatpush2.msra.mxu0 0.0
  %10040 = vmatprep.subr.mxu0 0.0
  %10041 = vmatpush2.msra.mxu0 0.0
  %10042 = vmatprep.subr.mxu0 0.0
  %10043 = vmatpush2.msra.mxu0 0.0
  %10044 = vmatprep.subr.mxu0 0.0
  %10045 = vmatpush2.msra.mxu0 0.0
  %10046 = vmatprep.subr.mxu0 0.0
  %10047 = vmatpush2.msra.mxu0 0.0
  %10048 = vmatprep.subr.mxu0 0.0
  %10049 = vmatpush2.msra.mxu0 0.0
  %10050 = vmatprep.subr.mxu0 0.0
  %10051 = vmatpush2.msra.mxu0 0.0
  %10052 = vmatprep.subr.mxu0 0.0
  %10053 = vmatpush2.msra.mxu0 0.0
  %10054 = vmatprep.subr.mxu0 0.0
  %10055 = vmatpush2.msra.mxu0 0.0
  %10056 = vmatprep.subr.mxu0 0.0
  %10057 = vmatpush2.msra.mxu0 0.0
  %10058 = vmatprep.subr.mxu0 0.0
  %10059 = vmatpush2.msra.mxu0 0.0
  %10060 = vmatprep.subr.mxu0 0.0
  %10061 = vmatpush2.msra.mxu0 0.0
  %10062 = vmatprep.subr.mxu0 0.0
  %10063 = vmatpush2.msra.mxu0 0.0
  %10064 = vmatprep.subr.mxu0 0.0
  %10065 = vmatpush2.msra.mxu0 0.0
  %10066 = vmatprep.subr.mxu0 0.0
  %10067 = vmatpush2.msra.mxu0 0.0
  %10068 = vmatprep.subr.mxu0 0.0
  %10069 = vmatpush2.msra.mxu0 0.0
  %10070 = vmatprep.mubr.f32.mxu0 0.0
  %10071 = vmatmul.mubr.f32.gmra.mxu0 %v9899
  %v10072 = vpop.f32.mrf.mxu0
  %v10073 = vadd.f32 0.0, %v10072
  %v10074 = vpop.f32.mrf.mxu0
  %10075 = vmatprep.mubr.f32.mxu0 0.0
  %10076 = vmatmul.mubr.f32.gmra.mxu0 %v9902
  %v10077 = vpop.f32.mrf.mxu0
  %v10078 = vadd.f32 0.0, %v10077
  %v10079 = vpop.f32.mrf.mxu0
  %10080 = vmatprep.mubr.f32.mxu0 0.0
  %10081 = vmatmul.mubr.f32.gmra.mxu0 %v9905
  %v10082 = vpop.f32.mrf.mxu0
  %v10083 = vadd.f32 0.0, %v10082
  %v10084 = vpop.f32.mrf.mxu0
  %10085 = vmatprep.mubr.f32.mxu0 0.0
  %10086 = vmatmul.mubr.f32.gmra.mxu0 %v9908
  %v10087 = vpop.f32.mrf.mxu0
  %v10088 = vadd.f32 0.0, %v10087
  %v10089 = vpop.f32.mrf.mxu0
  %10090 = vmatprep.mubr.f32.mxu0 0.0
  %10091 = vmatmul.mubr.f32.gmra.mxu0 %v9911
  %v10092 = vpop.f32.mrf.mxu0
  %v10093 = vadd.f32 0.0, %v10092
  %v10094 = vpop.f32.mrf.mxu0
  %10095 = vmatprep.mubr.f32.mxu0 0.0
  %10096 = vmatmul.mubr.f32.gmra.mxu0 %v9914
  %v10097 = vpop.f32.mrf.mxu0
  %v10098 = vadd.f32 0.0, %v10097
  %v10099 = vpop.f32.mrf.mxu0
  %10100 = vmatprep.mubr.f32.mxu0 0.0
  %10101 = vmatmul.mubr.f32.gmra.mxu0 %v9917
  %v10102 = vpop.f32.mrf.mxu0
  %v10103 = vadd.f32 0.0, %v10102
  %v10104 = vpop.f32.mrf.mxu0
  %10105 = vmatprep.mubr.f32.mxu0 0.0
  %10106 = vmatmul.mubr.f32.gmra.mxu0 %v9920
  %v10107 = vpop.f32.mrf.mxu0
  %v10108 = vadd.f32 0.0, %v10107
  %v10109 = vpop.f32.mrf.mxu0
  %10110 = vmatprep.mubr.f32.mxu0 0.0
  %10111 = vmatmul.mubr.f32.gmra.mxu0 %v9923
  %v10112 = vpop.f32.mrf.mxu0
  %v10113 = vadd.f32 0.0, %v10112
  %v10114 = vpop.f32.mrf.mxu0
  %10115 = vmatprep.mubr.f32.mxu0 0.0
  %10116 = vmatmul.mubr.f32.gmra.mxu0 %v9926
  %v10117 = vpop.f32.mrf.mxu0
  %v10118 = vadd.f32 0.0, %v10117
  %v10119 = vpop.f32.mrf.mxu0
  %10120 = vmatprep.mubr.f32.mxu0 0.0
  %10121 = vmatmul.mubr.f32.gmra.mxu0 %v9929
  %v10122 = vpop.f32.mrf.mxu0
  %v10123 = vadd.f32 0.0, %v10122
  %v10124 = vpop.f32.mrf.mxu0
  %10125 = vmatprep.mubr.f32.mxu0 0.0
  %10126 = vmatmul.mubr.f32.gmra.mxu0 %v9932
  %v10127 = vpop.f32.mrf.mxu0
  %v10128 = vadd.f32 0.0, %v10127
  %v10129 = vpop.f32.mrf.mxu0
  %10130 = vmatprep.mubr.f32.mxu0 0.0
  %10131 = vmatmul.mubr.f32.gmra.mxu0 %v9935
  %v10132 = vpop.f32.mrf.mxu0
  %v10133 = vadd.f32 0.0, %v10132
  %v10134 = vpop.f32.mrf.mxu0
  %10135 = vmatprep.mubr.f32.mxu0 0.0
  %10136 = vmatmul.mubr.f32.gmra.mxu0 %v9938
  %v10137 = vpop.f32.mrf.mxu0
  %v10138 = vadd.f32 0.0, %v10137
  %v10139 = vpop.f32.mrf.mxu0
  %10140 = vmatprep.mubr.f32.mxu0 0.0
  %10141 = vmatmul.mubr.f32.gmra.mxu0 %v9941
  %v10142 = vpop.f32.mrf.mxu0
  %v10143 = vadd.f32 0.0, %v10142
  %v10144 = vpop.f32.mrf.mxu0
  %10145 = vmatprep.mubr.f32.mxu0 0.0
  %10146 = vmatmul.mubr.f32.gmra.mxu0 %v9944
  %v10147 = vpop.f32.mrf.mxu0
  %v10148 = vadd.f32 0.0, %v10147
  %v10149 = vpop.f32.mrf.mxu0
  %10150 = vmatprep.mubr.f32.mxu0 0.0
  %10151 = vmatmul.mubr.f32.gmra.mxu0 %v9947
  %v10152 = vpop.f32.mrf.mxu0
  %v10153 = vadd.f32 0.0, %v10152
  %v10154 = vpop.f32.mrf.mxu0
  %10155 = vmatprep.mubr.f32.mxu0 0.0
  %10156 = vmatmul.mubr.f32.gmra.mxu0 %v9950
  %v10157 = vpop.f32.mrf.mxu0
  %v10158 = vadd.f32 0.0, %v10157
  %v10159 = vpop.f32.mrf.mxu0
  %10160 = vmatprep.mubr.f32.mxu0 0.0
  %10161 = vmatmul.mubr.f32.gmra.mxu0 %v9953
  %v10162 = vpop.f32.mrf.mxu0
  %v10163 = vadd.f32 0.0, %v10162
  %v10164 = vpop.f32.mrf.mxu0
  %10165 = vmatprep.mubr.f32.mxu0 0.0
  %10166 = vmatmul.mubr.f32.gmra.mxu0 %v9956
  %v10167 = vpop.f32.mrf.mxu0
  %v10168 = vadd.f32 0.0, %v10167
  %v10169 = vpop.f32.mrf.mxu0
  %10170 = vmatprep.mubr.f32.mxu0 0.0
  %10171 = vmatmul.mubr.f32.gmra.mxu0 %v9959
  %v10172 = vpop.f32.mrf.mxu0
  %v10173 = vadd.f32 0.0, %v10172
  %v10174 = vpop.f32.mrf.mxu0
  %10175 = vmatprep.mubr.f32.mxu0 0.0
  %10176 = vmatmul.mubr.f32.gmra.mxu0 %v9962
  %v10177 = vpop.f32.mrf.mxu0
  %v10178 = vadd.f32 0.0, %v10177
  %v10179 = vpop.f32.mrf.mxu0
  %10180 = vmatprep.mubr.f32.mxu0 0.0
  %10181 = vmatmul.mubr.f32.gmra.mxu0 %v9965
  %v10182 = vpop.f32.mrf.mxu0
  %v10183 = vadd.f32 0.0, %v10182
  %v10184 = vpop.f32.mrf.mxu0
  %10185 = vmatprep.mubr.f32.mxu0 0.0
  %10186 = vmatmul.mubr.f32.gmra.mxu0 %v9968
  %v10187 = vpop.f32.mrf.mxu0
  %v10188 = vadd.f32 0.0, %v10187
  %v10189 = vpop.f32.mrf.mxu0
  %10190 = vmatprep.mubr.f32.mxu0 0.0
  %10191 = vmatmul.mubr.f32.gmra.mxu0 %v9971
  %v10192 = vpop.f32.mrf.mxu0
  %v10193 = vadd.f32 0.0, %v10192
  %v10194 = vpop.f32.mrf.mxu0
  %10195 = vmatprep.mubr.f32.mxu0 0.0
  %10196 = vmatmul.mubr.f32.gmra.mxu0 %v9974
  %v10197 = vpop.f32.mrf.mxu0
  %v10198 = vadd.f32 0.0, %v10197
  %v10199 = vpop.f32.mrf.mxu0
  %10200 = vmatprep.mubr.f32.mxu0 0.0
  %10201 = vmatmul.mubr.f32.gmra.mxu0 %v9977
  %v10202 = vpop.f32.mrf.mxu0
  %v10203 = vadd.f32 0.0, %v10202
  %v10204 = vpop.f32.mrf.mxu0
  %10205 = vmatprep.mubr.f32.mxu0 0.0
  %10206 = vmatmul.mubr.f32.gmra.mxu0 %v9980
  %v10207 = vpop.f32.mrf.mxu0
  %v10208 = vadd.f32 0.0, %v10207
  %v10209 = vpop.f32.mrf.mxu0
  %10210 = vmatprep.mubr.f32.mxu0 0.0
  %10211 = vmatmul.mubr.f32.gmra.mxu0 %v9983
  %v10212 = vpop.f32.mrf.mxu0
  %v10213 = vadd.f32 0.0, %v10212
  %v10214 = vpop.f32.mrf.mxu0
  %10215 = vmatprep.mubr.f32.mxu0 0.0
  %10216 = vmatmul.mubr.f32.gmra.mxu0 %v9986
  %v10217 = vpop.f32.mrf.mxu0
  %v10218 = vadd.f32 0.0, %v10217
  %v10219 = vpop.f32.mrf.mxu0
  %10220 = vmatprep.mubr.f32.mxu0 0.0
  %10221 = vmatmul.mubr.f32.gmra.mxu0 %v9989
  %v10222 = vpop.f32.mrf.mxu0
  %v10223 = vadd.f32 0.0, %v10222
  %v10224 = vpop.f32.mrf.mxu0
  %10225 = vmatprep.mubr.f32.mxu0 0.0
  %10226 = vmatmul.mubr.f32.gmra.mxu0 %v9992
  %v10227 = vpop.f32.mrf.mxu0
  %v10228 = vadd.f32 0.0, %v10227
  %v10229 = vpop.f32.mrf.mxu0
  %10230 = vmatprep.mubr.f32.mxu0 0.0
  %10231 = vmatmul.mubr.f32.gmra.mxu0 %v9995
  %v10232 = vpop.f32.mrf.mxu0
  %v10233 = vadd.f32 0.0, %v10232
  %v10234 = vpop.f32.mrf.mxu0
  %10235 = vmatprep.mubr.f32.mxu0 0.0
  %10236 = vmatmul.mubr.f32.gmra.mxu0 %v9998
  %v10237 = vpop.f32.mrf.mxu0
  %v10238 = vadd.f32 0.0, %v10237
  %v10239 = vpop.f32.mrf.mxu0
  %10240 = vmatprep.mubr.f32.mxu0 0.0
  %10241 = vmatmul.mubr.f32.gmra.mxu0 %v10001
  %v10242 = vpop.f32.mrf.mxu0
  %v10243 = vadd.f32 0.0, %v10242
  %v10244 = vpop.f32.mrf.mxu0
  %10245 = vmatprep.mubr.f32.mxu0 0.0
  %10246 = vmatmul.mubr.f32.gmra.mxu0 %v10004
  %v10247 = vpop.f32.mrf.mxu0
  %v10248 = vadd.f32 0.0, %v10247
  %v10249 = vpop.f32.mrf.mxu0
  %10250 = vdwg.mxu0
  %v10251 = vadd.f32 %v9153, %v10073
  %v10252 = vadd.f32 %v9154, %v10078
  %v10253 = vadd.f32 %v9155, %v10083
  %v10254 = vadd.f32 %v9156, %v10088
  %v10255 = vadd.f32 %v9157, %v10093
  %v10256 = vadd.f32 %v9158, %v10098
  %v10257 = vadd.f32 %v9159, %v10103
  %v10258 = vadd.f32 %v9160, %v10108
  %v10259 = vadd.f32 %v9161, %v10113
  %v10260 = vadd.f32 %v9162, %v10118
  %v10261 = vadd.f32 %v9163, %v10123
  %v10262 = vadd.f32 %v9164, %v10128
  %v10263 = vadd.f32 %v9165, %v10133
  %v10264 = vadd.f32 %v9166, %v10138
  %v10265 = vadd.f32 %v9167, %v10143
  %v10266 = vadd.f32 %v9168, %v10148
  %v10267 = vadd.f32 %v9169, %v10153
  %v10268 = vadd.f32 %v9170, %v10158
  %v10269 = vadd.f32 %v9171, %v10163
  %v10270 = vadd.f32 %v9172, %v10168
  %v10271 = vadd.f32 %v9173, %v10173
  %v10272 = vadd.f32 %v9174, %v10178
  %v10273 = vadd.f32 %v9175, %v10183
  %v10274 = vadd.f32 %v9176, %v10188
  %v10275 = vadd.f32 %v9177, %v10193
  %v10276 = vadd.f32 %v9178, %v10198
  %v10277 = vadd.f32 %v9179, %v10203
  %v10278 = vadd.f32 %v9180, %v10208
  %v10279 = vadd.f32 %v9181, %v10213
  %v10280 = vadd.f32 %v9182, %v10218
  %v10281 = vadd.f32 %v9183, %v10223
  %v10282 = vadd.f32 %v9184, %v10228
  %v10283 = vadd.f32 %v9185, %v10233
  %v10284 = vadd.f32 %v9186, %v10238
  %v10285 = vadd.f32 %v9187, %v10243
  %v10286 = vadd.f32 %v9188, %v10248
  %v10287 = vld [vmem:[%s5] sm:$0x1]
  %v10289 = vlaneseq
  %v10290 = vshrl.u32 %v10289, 7
  %v10291 = vsub.s32 0, %v10290
  %v10292 = vrot.slane %v10287, %v10291
  %v10294 = vadd.f32 %v10251, %v10292
  %v10295 = vadd.f32 %v10252, %v10292
  %v10296 = vadd.f32 %v10253, %v10292
  %v10297 = vadd.f32 %v10254, %v10292
  %v10298 = vadd.f32 %v10255, %v10292
  %v10299 = vadd.f32 %v10256, %v10292
  %v10300 = vadd.f32 %v10257, %v10292
  %v10301 = vadd.f32 %v10258, %v10292
  %v10302 = vadd.f32 %v10259, %v10292
  %v10303 = vadd.f32 %v10260, %v10292
  %v10304 = vadd.f32 %v10261, %v10292
  %v10305 = vadd.f32 %v10262, %v10292
  %v10306 = vadd.f32 %v10263, %v10292
  %v10307 = vadd.f32 %v10264, %v10292
  %v10308 = vadd.f32 %v10265, %v10292
  %v10309 = vadd.f32 %v10266, %v10292
  %v10310 = vadd.f32 %v10267, %v10292
  %v10311 = vadd.f32 %v10268, %v10292
  %v10312 = vadd.f32 %v10269, %v10292
  %v10313 = vadd.f32 %v10270, %v10292
  %v10314 = vadd.f32 %v10271, %v10292
  %v10315 = vadd.f32 %v10272, %v10292
  %v10316 = vadd.f32 %v10273, %v10292
  %v10317 = vadd.f32 %v10274, %v10292
  %v10318 = vadd.f32 %v10275, %v10292
  %v10319 = vadd.f32 %v10276, %v10292
  %v10320 = vadd.f32 %v10277, %v10292
  %v10321 = vadd.f32 %v10278, %v10292
  %v10322 = vadd.f32 %v10279, %v10292
  %v10323 = vadd.f32 %v10280, %v10292
  %v10324 = vadd.f32 %v10281, %v10292
  %v10325 = vadd.f32 %v10282, %v10292
  %v10326 = vadd.f32 %v10283, %v10292
  %v10327 = vadd.f32 %v10284, %v10292
  %v10328 = vadd.f32 %v10285, %v10292
  %v10329 = vadd.f32 %v10286, %v10292
  %v10330 = vmax.f32 %v10294, 0.0
  %v10331 = vmax.f32 %v10295, 0.0
  %v10332 = vmax.f32 %v10296, 0.0
  %v10333 = vmax.f32 %v10297, 0.0
  %v10334 = vmax.f32 %v10298, 0.0
  %v10335 = vmax.f32 %v10299, 0.0
  %v10336 = vmax.f32 %v10300, 0.0
  %v10337 = vmax.f32 %v10301, 0.0
  %v10338 = vmax.f32 %v10302, 0.0
  %v10339 = vmax.f32 %v10303, 0.0
  %v10340 = vmax.f32 %v10304, 0.0
  %v10341 = vmax.f32 %v10305, 0.0
  %v10342 = vmax.f32 %v10306, 0.0
  %v10343 = vmax.f32 %v10307, 0.0
  %v10344 = vmax.f32 %v10308, 0.0
  %v10345 = vmax.f32 %v10309, 0.0
  %v10346 = vmax.f32 %v10310, 0.0
  %v10347 = vmax.f32 %v10311, 0.0
  %v10348 = vmax.f32 %v10312, 0.0
  %v10349 = vmax.f32 %v10313, 0.0
  %v10350 = vmax.f32 %v10314, 0.0
  %v10351 = vmax.f32 %v10315, 0.0
  %v10352 = vmax.f32 %v10316, 0.0
  %v10353 = vmax.f32 %v10317, 0.0
  %v10354 = vmax.f32 %v10318, 0.0
  %v10355 = vmax.f32 %v10319, 0.0
  %v10356 = vmax.f32 %v10320, 0.0
  %v10357 = vmax.f32 %v10321, 0.0
  %v10358 = vmax.f32 %v10322, 0.0
  %v10359 = vmax.f32 %v10323, 0.0
  %v10360 = vmax.f32 %v10324, 0.0
  %v10361 = vmax.f32 %v10325, 0.0
  %v10362 = vmax.f32 %v10326, 0.0
  %v10363 = vmax.f32 %v10327, 0.0
  %v10364 = vmax.f32 %v10328, 0.0
  %v10365 = vmax.f32 %v10329, 0.0
  %v10366 = vld [vmem:[%s6] sm:$0xff]
  %v10367 = vld [vmem:[%s6 + $0x8] sm:$0xff]
  %s10368 = scalar_lea.vmem %s6, 16
  %v10369 = vld [vmem:[%s10368] sm:$0xff]
  %v10370 = vld [vmem:[%s10368 + $0x8] sm:$0xff]
  %vm10371 = vcmask 130048
  %v10373 = vsel %vm10371, %v10331, 0
  %10375 = vmatprep.subr.mxu0 0.0
  %10376 = vmatpush1.msra.mxu0 0.0
  %10377 = vmatprep.subr.mxu0 0.0
  %10378 = vmatpush1.msra.mxu0 0.0
  %10379 = vmatprep.subr.mxu0 0.0
  %10380 = vmatpush1.msra.mxu0 0.0
  %10381 = vmatprep.subr.mxu0 0.0
  %10382 = vmatpush1.msra.mxu0 0.0
  %10383 = vmatprep.subr.mxu0 0.0
  %10384 = vmatpush1.msra.mxu0 0.0
  %10385 = vmatprep.subr.mxu0 0.0
  %10386 = vmatpush1.msra.mxu0 0.0
  %10387 = vmatprep.subr.mxu0 0.0
  %10388 = vmatpush1.msra.mxu0 0.0
  %10389 = vmatprep.subr.mxu0 0.0
  %10390 = vmatpush1.msra.mxu0 0.0
  %10391 = vmatprep.subr.mxu0 0.0
  %10392 = vmatpush1.msra.mxu0 0.0
  %10393 = vmatprep.subr.mxu0 0.0
  %10394 = vmatpush1.msra.mxu0 0.0
  %10395 = vmatprep.subr.mxu0 0.0
  %10396 = vmatpush1.msra.mxu0 0.0
  %10397 = vmatprep.subr.mxu0 0.0
  %10398 = vmatpush1.msra.mxu0 0.0
  %10399 = vmatprep.subr.mxu0 0.0
  %10400 = vmatpush1.msra.mxu0 0.0
  %10401 = vmatprep.subr.mxu0 0.0
  %10402 = vmatpush1.msra.mxu0 0.0
  %10403 = vmatprep.subr.mxu0 0.0
  %10404 = vmatpush1.msra.mxu0 %v10370
  %10405 = vmatprep.subr.mxu0 0.0
  %10406 = vmatpush1.msra.mxu0 %v10369
  %10407 = vmatprep.subr.mxu0 0.0
  %10408 = vmatpush2.msra.mxu0 0.0
  %10409 = vmatprep.subr.mxu0 0.0
  %10410 = vmatpush2.msra.mxu0 0.0
  %10411 = vmatprep.subr.mxu0 0.0
  %10412 = vmatpush2.msra.mxu0 0.0
  %10413 = vmatprep.subr.mxu0 0.0
  %10414 = vmatpush2.msra.mxu0 0.0
  %10415 = vmatprep.subr.mxu0 0.0
  %10416 = vmatpush2.msra.mxu0 0.0
  %10417 = vmatprep.subr.mxu0 0.0
  %10418 = vmatpush2.msra.mxu0 0.0
  %10419 = vmatprep.subr.mxu0 0.0
  %10420 = vmatpush2.msra.mxu0 0.0
  %10421 = vmatprep.subr.mxu0 0.0
  %10422 = vmatpush2.msra.mxu0 0.0
  %10423 = vmatprep.subr.mxu0 0.0
  %10424 = vmatpush2.msra.mxu0 0.0
  %10425 = vmatprep.subr.mxu0 0.0
  %10426 = vmatpush2.msra.mxu0 0.0
  %10427 = vmatprep.subr.mxu0 0.0
  %10428 = vmatpush2.msra.mxu0 0.0
  %10429 = vmatprep.subr.mxu0 0.0
  %10430 = vmatpush2.msra.mxu0 0.0
  %10431 = vmatprep.subr.mxu0 0.0
  %10432 = vmatpush2.msra.mxu0 0.0
  %10433 = vmatprep.subr.mxu0 0.0
  %10434 = vmatpush2.msra.mxu0 0.0
  %10435 = vmatprep.subr.mxu0 0.0
  %10436 = vmatpush2.msra.mxu0 0.0
  %10437 = vmatprep.subr.mxu0 0.0
  %10438 = vmatpush2.msra.mxu0 0.0
  %10439 = vmatprep.mubr.f32.mxu0 0.0
  %10440 = vmatmul.mubr.f32.gmra.mxu0 %v10373
  %v10441 = vpop.f32.mrf.mxu0
  %v10442 = vadd.f32 0.0, %v10441
  %v10443 = vpop.f32.mrf.mxu0
  %10444 = vdwg.mxu0
  %v10446 = vsel %vm10371, %v10330, 0
  %10448 = vmatprep.subr.mxu0 0.0
  %10449 = vmatpush1.msra.mxu0 0.0
  %10450 = vmatprep.subr.mxu0 0.0
  %10451 = vmatpush1.msra.mxu0 0.0
  %10452 = vmatprep.subr.mxu0 0.0
  %10453 = vmatpush1.msra.mxu0 0.0
  %10454 = vmatprep.subr.mxu0 0.0
  %10455 = vmatpush1.msra.mxu0 0.0
  %10456 = vmatprep.subr.mxu0 0.0
  %10457 = vmatpush1.msra.mxu0 0.0
  %10458 = vmatprep.subr.mxu0 0.0
  %10459 = vmatpush1.msra.mxu0 0.0
  %10460 = vmatprep.subr.mxu0 0.0
  %10461 = vmatpush1.msra.mxu0 0.0
  %10462 = vmatprep.subr.mxu0 0.0
  %10463 = vmatpush1.msra.mxu0 0.0
  %10464 = vmatprep.subr.mxu0 0.0
  %10465 = vmatpush1.msra.mxu0 0.0
  %10466 = vmatprep.subr.mxu0 0.0
  %10467 = vmatpush1.msra.mxu0 0.0
  %10468 = vmatprep.subr.mxu0 0.0
  %10469 = vmatpush1.msra.mxu0 0.0
  %10470 = vmatprep.subr.mxu0 0.0
  %10471 = vmatpush1.msra.mxu0 0.0
  %10472 = vmatprep.subr.mxu0 0.0
  %10473 = vmatpush1.msra.mxu0 0.0
  %10474 = vmatprep.subr.mxu0 0.0
  %10475 = vmatpush1.msra.mxu0 0.0
  %10476 = vmatprep.subr.mxu0 0.0
  %10477 = vmatpush1.msra.mxu0 %v10367
  %10478 = vmatprep.subr.mxu0 0.0
  %10479 = vmatpush1.msra.mxu0 %v10366
  %10480 = vmatprep.subr.mxu0 0.0
  %10481 = vmatpush2.msra.mxu0 0.0
  %10482 = vmatprep.subr.mxu0 0.0
  %10483 = vmatpush2.msra.mxu0 0.0
  %10484 = vmatprep.subr.mxu0 0.0
  %10485 = vmatpush2.msra.mxu0 0.0
  %10486 = vmatprep.subr.mxu0 0.0
  %10487 = vmatpush2.msra.mxu0 0.0
  %10488 = vmatprep.subr.mxu0 0.0
  %10489 = vmatpush2.msra.mxu0 0.0
  %10490 = vmatprep.subr.mxu0 0.0
  %10491 = vmatpush2.msra.mxu0 0.0
  %10492 = vmatprep.subr.mxu0 0.0
  %10493 = vmatpush2.msra.mxu0 0.0
  %10494 = vmatprep.subr.mxu0 0.0
  %10495 = vmatpush2.msra.mxu0 0.0
  %10496 = vmatprep.subr.mxu0 0.0
  %10497 = vmatpush2.msra.mxu0 0.0
  %10498 = vmatprep.subr.mxu0 0.0
  %10499 = vmatpush2.msra.mxu0 0.0
  %10500 = vmatprep.subr.mxu0 0.0
  %10501 = vmatpush2.msra.mxu0 0.0
  %10502 = vmatprep.subr.mxu0 0.0
  %10503 = vmatpush2.msra.mxu0 0.0
  %10504 = vmatprep.subr.mxu0 0.0
  %10505 = vmatpush2.msra.mxu0 0.0
  %10506 = vmatprep.subr.mxu0 0.0
  %10507 = vmatpush2.msra.mxu0 0.0
  %10508 = vmatprep.subr.mxu0 0.0
  %10509 = vmatpush2.msra.mxu0 0.0
  %10510 = vmatprep.subr.mxu0 0.0
  %10511 = vmatpush2.msra.mxu0 0.0
  %10512 = vmatprep.mubr.f32.mxu0 0.0
  %10513 = vmatmul.mubr.f32.gmra.mxu0 %v10446
  %v10514 = vpop.f32.mrf.mxu0
  %v10515 = vadd.f32 %v10442, %v10514
  %v10516 = vpop.f32.mrf.mxu0
  %10517 = vdwg.mxu0
  %s10518 = scalar_lea.vmem %s6, 32
  %v10519 = vld [vmem:[%s10518] sm:$0xff]
  %v10520 = vld [vmem:[%s10518 + $0x8] sm:$0xff]
  %v10522 = vsel %vm10371, %v10332, 0
  %10524 = vmatprep.subr.mxu0 0.0
  %10525 = vmatpush1.msra.mxu0 0.0
  %10526 = vmatprep.subr.mxu0 0.0
  %10527 = vmatpush1.msra.mxu0 0.0
  %10528 = vmatprep.subr.mxu0 0.0
  %10529 = vmatpush1.msra.mxu0 0.0
  %10530 = vmatprep.subr.mxu0 0.0
  %10531 = vmatpush1.msra.mxu0 0.0
  %10532 = vmatprep.subr.mxu0 0.0
  %10533 = vmatpush1.msra.mxu0 0.0
  %10534 = vmatprep.subr.mxu0 0.0
  %10535 = vmatpush1.msra.mxu0 0.0
  %10536 = vmatprep.subr.mxu0 0.0
  %10537 = vmatpush1.msra.mxu0 0.0
  %10538 = vmatprep.subr.mxu0 0.0
  %10539 = vmatpush1.msra.mxu0 0.0
  %10540 = vmatprep.subr.mxu0 0.0
  %10541 = vmatpush1.msra.mxu0 0.0
  %10542 = vmatprep.subr.mxu0 0.0
  %10543 = vmatpush1.msra.mxu0 0.0
  %10544 = vmatprep.subr.mxu0 0.0
  %10545 = vmatpush1.msra.mxu0 0.0
  %10546 = vmatprep.subr.mxu0 0.0
  %10547 = vmatpush1.msra.mxu0 0.0
  %10548 = vmatprep.subr.mxu0 0.0
  %10549 = vmatpush1.msra.mxu0 0.0
  %10550 = vmatprep.subr.mxu0 0.0
  %10551 = vmatpush1.msra.mxu0 0.0
  %10552 = vmatprep.subr.mxu0 0.0
  %10553 = vmatpush1.msra.mxu0 %v10520
  %10554 = vmatprep.subr.mxu0 0.0
  %10555 = vmatpush1.msra.mxu0 %v10519
  %10556 = vmatprep.subr.mxu0 0.0
  %10557 = vmatpush2.msra.mxu0 0.0
  %10558 = vmatprep.subr.mxu0 0.0
  %10559 = vmatpush2.msra.mxu0 0.0
  %10560 = vmatprep.subr.mxu0 0.0
  %10561 = vmatpush2.msra.mxu0 0.0
  %10562 = vmatprep.subr.mxu0 0.0
  %10563 = vmatpush2.msra.mxu0 0.0
  %10564 = vmatprep.subr.mxu0 0.0
  %10565 = vmatpush2.msra.mxu0 0.0
  %10566 = vmatprep.subr.mxu0 0.0
  %10567 = vmatpush2.msra.mxu0 0.0
  %10568 = vmatprep.subr.mxu0 0.0
  %10569 = vmatpush2.msra.mxu0 0.0
  %10570 = vmatprep.subr.mxu0 0.0
  %10571 = vmatpush2.msra.mxu0 0.0
  %10572 = vmatprep.subr.mxu0 0.0
  %10573 = vmatpush2.msra.mxu0 0.0
  %10574 = vmatprep.subr.mxu0 0.0
  %10575 = vmatpush2.msra.mxu0 0.0
  %10576 = vmatprep.subr.mxu0 0.0
  %10577 = vmatpush2.msra.mxu0 0.0
  %10578 = vmatprep.subr.mxu0 0.0
  %10579 = vmatpush2.msra.mxu0 0.0
  %10580 = vmatprep.subr.mxu0 0.0
  %10581 = vmatpush2.msra.mxu0 0.0
  %10582 = vmatprep.subr.mxu0 0.0
  %10583 = vmatpush2.msra.mxu0 0.0
  %10584 = vmatprep.subr.mxu0 0.0
  %10585 = vmatpush2.msra.mxu0 0.0
  %10586 = vmatprep.subr.mxu0 0.0
  %10587 = vmatpush2.msra.mxu0 0.0
  %10588 = vmatprep.mubr.f32.mxu0 0.0
  %10589 = vmatmul.mubr.f32.gmra.mxu0 %v10522
  %v10590 = vpop.f32.mrf.mxu0
  %v10591 = vadd.f32 0.0, %v10590
  %v10592 = vpop.f32.mrf.mxu0
  %10593 = vdwg.mxu0
  %v10594 = vadd.f32 %v10515, %v10591
  %s10595 = scalar_lea.vmem %s6, 48
  %v10596 = vld [vmem:[%s10595] sm:$0xff]
  %v10597 = vld [vmem:[%s10595 + $0x8] sm:$0xff]
  %v10599 = vsel %vm10371, %v10333, 0
  %10601 = vmatprep.subr.mxu0 0.0
  %10602 = vmatpush1.msra.mxu0 0.0
  %10603 = vmatprep.subr.mxu0 0.0
  %10604 = vmatpush1.msra.mxu0 0.0
  %10605 = vmatprep.subr.mxu0 0.0
  %10606 = vmatpush1.msra.mxu0 0.0
  %10607 = vmatprep.subr.mxu0 0.0
  %10608 = vmatpush1.msra.mxu0 0.0
  %10609 = vmatprep.subr.mxu0 0.0
  %10610 = vmatpush1.msra.mxu0 0.0
  %10611 = vmatprep.subr.mxu0 0.0
  %10612 = vmatpush1.msra.mxu0 0.0
  %10613 = vmatprep.subr.mxu0 0.0
  %10614 = vmatpush1.msra.mxu0 0.0
  %10615 = vmatprep.subr.mxu0 0.0
  %10616 = vmatpush1.msra.mxu0 0.0
  %10617 = vmatprep.subr.mxu0 0.0
  %10618 = vmatpush1.msra.mxu0 0.0
  %10619 = vmatprep.subr.mxu0 0.0
  %10620 = vmatpush1.msra.mxu0 0.0
  %10621 = vmatprep.subr.mxu0 0.0
  %10622 = vmatpush1.msra.mxu0 0.0
  %10623 = vmatprep.subr.mxu0 0.0
  %10624 = vmatpush1.msra.mxu0 0.0
  %10625 = vmatprep.subr.mxu0 0.0
  %10626 = vmatpush1.msra.mxu0 0.0
  %10627 = vmatprep.subr.mxu0 0.0
  %10628 = vmatpush1.msra.mxu0 0.0
  %10629 = vmatprep.subr.mxu0 0.0
  %10630 = vmatpush1.msra.mxu0 %v10597
  %10631 = vmatprep.subr.mxu0 0.0
  %10632 = vmatpush1.msra.mxu0 %v10596
  %10633 = vmatprep.subr.mxu0 0.0
  %10634 = vmatpush2.msra.mxu0 0.0
  %10635 = vmatprep.subr.mxu0 0.0
  %10636 = vmatpush2.msra.mxu0 0.0
  %10637 = vmatprep.subr.mxu0 0.0
  %10638 = vmatpush2.msra.mxu0 0.0
  %10639 = vmatprep.subr.mxu0 0.0
  %10640 = vmatpush2.msra.mxu0 0.0
  %10641 = vmatprep.subr.mxu0 0.0
  %10642 = vmatpush2.msra.mxu0 0.0
  %10643 = vmatprep.subr.mxu0 0.0
  %10644 = vmatpush2.msra.mxu0 0.0
  %10645 = vmatprep.subr.mxu0 0.0
  %10646 = vmatpush2.msra.mxu0 0.0
  %10647 = vmatprep.subr.mxu0 0.0
  %10648 = vmatpush2.msra.mxu0 0.0
  %10649 = vmatprep.subr.mxu0 0.0
  %10650 = vmatpush2.msra.mxu0 0.0
  %10651 = vmatprep.subr.mxu0 0.0
  %10652 = vmatpush2.msra.mxu0 0.0
  %10653 = vmatprep.subr.mxu0 0.0
  %10654 = vmatpush2.msra.mxu0 0.0
  %10655 = vmatprep.subr.mxu0 0.0
  %10656 = vmatpush2.msra.mxu0 0.0
  %10657 = vmatprep.subr.mxu0 0.0
  %10658 = vmatpush2.msra.mxu0 0.0
  %10659 = vmatprep.subr.mxu0 0.0
  %10660 = vmatpush2.msra.mxu0 0.0
  %10661 = vmatprep.subr.mxu0 0.0
  %10662 = vmatpush2.msra.mxu0 0.0
  %10663 = vmatprep.subr.mxu0 0.0
  %10664 = vmatpush2.msra.mxu0 0.0
  %10665 = vmatprep.mubr.f32.mxu0 0.0
  %10666 = vmatmul.mubr.f32.gmra.mxu0 %v10599
  %v10667 = vpop.f32.mrf.mxu0
  %v10668 = vadd.f32 0.0, %v10667
  %v10669 = vpop.f32.mrf.mxu0
  %10670 = vdwg.mxu0
  %v10671 = vadd.f32 %v10594, %v10668
  %s10672 = scalar_lea.vmem %s6, 64
  %v10673 = vld [vmem:[%s10672] sm:$0xff]
  %v10674 = vld [vmem:[%s10672 + $0x8] sm:$0xff]
  %v10676 = vsel %vm10371, %v10334, 0
  %10678 = vmatprep.subr.mxu0 0.0
  %10679 = vmatpush1.msra.mxu0 0.0
  %10680 = vmatprep.subr.mxu0 0.0
  %10681 = vmatpush1.msra.mxu0 0.0
  %10682 = vmatprep.subr.mxu0 0.0
  %10683 = vmatpush1.msra.mxu0 0.0
  %10684 = vmatprep.subr.mxu0 0.0
  %10685 = vmatpush1.msra.mxu0 0.0
  %10686 = vmatprep.subr.mxu0 0.0
  %10687 = vmatpush1.msra.mxu0 0.0
  %10688 = vmatprep.subr.mxu0 0.0
  %10689 = vmatpush1.msra.mxu0 0.0
  %10690 = vmatprep.subr.mxu0 0.0
  %10691 = vmatpush1.msra.mxu0 0.0
  %10692 = vmatprep.subr.mxu0 0.0
  %10693 = vmatpush1.msra.mxu0 0.0
  %10694 = vmatprep.subr.mxu0 0.0
  %10695 = vmatpush1.msra.mxu0 0.0
  %10696 = vmatprep.subr.mxu0 0.0
  %10697 = vmatpush1.msra.mxu0 0.0
  %10698 = vmatprep.subr.mxu0 0.0
  %10699 = vmatpush1.msra.mxu0 0.0
  %10700 = vmatprep.subr.mxu0 0.0
  %10701 = vmatpush1.msra.mxu0 0.0
  %10702 = vmatprep.subr.mxu0 0.0
  %10703 = vmatpush1.msra.mxu0 0.0
  %10704 = vmatprep.subr.mxu0 0.0
  %10705 = vmatpush1.msra.mxu0 0.0
  %10706 = vmatprep.subr.mxu0 0.0
  %10707 = vmatpush1.msra.mxu0 %v10674
  %10708 = vmatprep.subr.mxu0 0.0
  %10709 = vmatpush1.msra.mxu0 %v10673
  %10710 = vmatprep.subr.mxu0 0.0
  %10711 = vmatpush2.msra.mxu0 0.0
  %10712 = vmatprep.subr.mxu0 0.0
  %10713 = vmatpush2.msra.mxu0 0.0
  %10714 = vmatprep.subr.mxu0 0.0
  %10715 = vmatpush2.msra.mxu0 0.0
  %10716 = vmatprep.subr.mxu0 0.0
  %10717 = vmatpush2.msra.mxu0 0.0
  %10718 = vmatprep.subr.mxu0 0.0
  %10719 = vmatpush2.msra.mxu0 0.0
  %10720 = vmatprep.subr.mxu0 0.0
  %10721 = vmatpush2.msra.mxu0 0.0
  %10722 = vmatprep.subr.mxu0 0.0
  %10723 = vmatpush2.msra.mxu0 0.0
  %10724 = vmatprep.subr.mxu0 0.0
  %10725 = vmatpush2.msra.mxu0 0.0
  %10726 = vmatprep.subr.mxu0 0.0
  %10727 = vmatpush2.msra.mxu0 0.0
  %10728 = vmatprep.subr.mxu0 0.0
  %10729 = vmatpush2.msra.mxu0 0.0
  %10730 = vmatprep.subr.mxu0 0.0
  %10731 = vmatpush2.msra.mxu0 0.0
  %10732 = vmatprep.subr.mxu0 0.0
  %10733 = vmatpush2.msra.mxu0 0.0
  %10734 = vmatprep.subr.mxu0 0.0
  %10735 = vmatpush2.msra.mxu0 0.0
  %10736 = vmatprep.subr.mxu0 0.0
  %10737 = vmatpush2.msra.mxu0 0.0
  %10738 = vmatprep.subr.mxu0 0.0
  %10739 = vmatpush2.msra.mxu0 0.0
  %10740 = vmatprep.subr.mxu0 0.0
  %10741 = vmatpush2.msra.mxu0 0.0
  %10742 = vmatprep.mubr.f32.mxu0 0.0
  %10743 = vmatmul.mubr.f32.gmra.mxu0 %v10676
  %v10744 = vpop.f32.mrf.mxu0
  %v10745 = vadd.f32 0.0, %v10744
  %v10746 = vpop.f32.mrf.mxu0
  %10747 = vdwg.mxu0
  %v10748 = vadd.f32 %v10671, %v10745
  %s10749 = scalar_lea.vmem %s6, 80
  %v10750 = vld [vmem:[%s10749] sm:$0xff]
  %v10751 = vld [vmem:[%s10749 + $0x8] sm:$0xff]
  %v10753 = vsel %vm10371, %v10335, 0
  %10755 = vmatprep.subr.mxu0 0.0
  %10756 = vmatpush1.msra.mxu0 0.0
  %10757 = vmatprep.subr.mxu0 0.0
  %10758 = vmatpush1.msra.mxu0 0.0
  %10759 = vmatprep.subr.mxu0 0.0
  %10760 = vmatpush1.msra.mxu0 0.0
  %10761 = vmatprep.subr.mxu0 0.0
  %10762 = vmatpush1.msra.mxu0 0.0
  %10763 = vmatprep.subr.mxu0 0.0
  %10764 = vmatpush1.msra.mxu0 0.0
  %10765 = vmatprep.subr.mxu0 0.0
  %10766 = vmatpush1.msra.mxu0 0.0
  %10767 = vmatprep.subr.mxu0 0.0
  %10768 = vmatpush1.msra.mxu0 0.0
  %10769 = vmatprep.subr.mxu0 0.0
  %10770 = vmatpush1.msra.mxu0 0.0
  %10771 = vmatprep.subr.mxu0 0.0
  %10772 = vmatpush1.msra.mxu0 0.0
  %10773 = vmatprep.subr.mxu0 0.0
  %10774 = vmatpush1.msra.mxu0 0.0
  %10775 = vmatprep.subr.mxu0 0.0
  %10776 = vmatpush1.msra.mxu0 0.0
  %10777 = vmatprep.subr.mxu0 0.0
  %10778 = vmatpush1.msra.mxu0 0.0
  %10779 = vmatprep.subr.mxu0 0.0
  %10780 = vmatpush1.msra.mxu0 0.0
  %10781 = vmatprep.subr.mxu0 0.0
  %10782 = vmatpush1.msra.mxu0 0.0
  %10783 = vmatprep.subr.mxu0 0.0
  %10784 = vmatpush1.msra.mxu0 %v10751
  %10785 = vmatprep.subr.mxu0 0.0
  %10786 = vmatpush1.msra.mxu0 %v10750
  %10787 = vmatprep.subr.mxu0 0.0
  %10788 = vmatpush2.msra.mxu0 0.0
  %10789 = vmatprep.subr.mxu0 0.0
  %10790 = vmatpush2.msra.mxu0 0.0
  %10791 = vmatprep.subr.mxu0 0.0
  %10792 = vmatpush2.msra.mxu0 0.0
  %10793 = vmatprep.subr.mxu0 0.0
  %10794 = vmatpush2.msra.mxu0 0.0
  %10795 = vmatprep.subr.mxu0 0.0
  %10796 = vmatpush2.msra.mxu0 0.0
  %10797 = vmatprep.subr.mxu0 0.0
  %10798 = vmatpush2.msra.mxu0 0.0
  %10799 = vmatprep.subr.mxu0 0.0
  %10800 = vmatpush2.msra.mxu0 0.0
  %10801 = vmatprep.subr.mxu0 0.0
  %10802 = vmatpush2.msra.mxu0 0.0
  %10803 = vmatprep.subr.mxu0 0.0
  %10804 = vmatpush2.msra.mxu0 0.0
  %10805 = vmatprep.subr.mxu0 0.0
  %10806 = vmatpush2.msra.mxu0 0.0
  %10807 = vmatprep.subr.mxu0 0.0
  %10808 = vmatpush2.msra.mxu0 0.0
  %10809 = vmatprep.subr.mxu0 0.0
  %10810 = vmatpush2.msra.mxu0 0.0
  %10811 = vmatprep.subr.mxu0 0.0
  %10812 = vmatpush2.msra.mxu0 0.0
  %10813 = vmatprep.subr.mxu0 0.0
  %10814 = vmatpush2.msra.mxu0 0.0
  %10815 = vmatprep.subr.mxu0 0.0
  %10816 = vmatpush2.msra.mxu0 0.0
  %10817 = vmatprep.subr.mxu0 0.0
  %10818 = vmatpush2.msra.mxu0 0.0
  %10819 = vmatprep.mubr.f32.mxu0 0.0
  %10820 = vmatmul.mubr.f32.gmra.mxu0 %v10753
  %v10821 = vpop.f32.mrf.mxu0
  %v10822 = vadd.f32 0.0, %v10821
  %v10823 = vpop.f32.mrf.mxu0
  %10824 = vdwg.mxu0
  %v10825 = vadd.f32 %v10748, %v10822
  %s10826 = scalar_lea.vmem %s6, 96
  %v10827 = vld [vmem:[%s10826] sm:$0xff]
  %v10828 = vld [vmem:[%s10826 + $0x8] sm:$0xff]
  %v10830 = vsel %vm10371, %v10336, 0
  %10832 = vmatprep.subr.mxu0 0.0
  %10833 = vmatpush1.msra.mxu0 0.0
  %10834 = vmatprep.subr.mxu0 0.0
  %10835 = vmatpush1.msra.mxu0 0.0
  %10836 = vmatprep.subr.mxu0 0.0
  %10837 = vmatpush1.msra.mxu0 0.0
  %10838 = vmatprep.subr.mxu0 0.0
  %10839 = vmatpush1.msra.mxu0 0.0
  %10840 = vmatprep.subr.mxu0 0.0
  %10841 = vmatpush1.msra.mxu0 0.0
  %10842 = vmatprep.subr.mxu0 0.0
  %10843 = vmatpush1.msra.mxu0 0.0
  %10844 = vmatprep.subr.mxu0 0.0
  %10845 = vmatpush1.msra.mxu0 0.0
  %10846 = vmatprep.subr.mxu0 0.0
  %10847 = vmatpush1.msra.mxu0 0.0
  %10848 = vmatprep.subr.mxu0 0.0
  %10849 = vmatpush1.msra.mxu0 0.0
  %10850 = vmatprep.subr.mxu0 0.0
  %10851 = vmatpush1.msra.mxu0 0.0
  %10852 = vmatprep.subr.mxu0 0.0
  %10853 = vmatpush1.msra.mxu0 0.0
  %10854 = vmatprep.subr.mxu0 0.0
  %10855 = vmatpush1.msra.mxu0 0.0
  %10856 = vmatprep.subr.mxu0 0.0
  %10857 = vmatpush1.msra.mxu0 0.0
  %10858 = vmatprep.subr.mxu0 0.0
  %10859 = vmatpush1.msra.mxu0 0.0
  %10860 = vmatprep.subr.mxu0 0.0
  %10861 = vmatpush1.msra.mxu0 %v10828
  %10862 = vmatprep.subr.mxu0 0.0
  %10863 = vmatpush1.msra.mxu0 %v10827
  %10864 = vmatprep.subr.mxu0 0.0
  %10865 = vmatpush2.msra.mxu0 0.0
  %10866 = vmatprep.subr.mxu0 0.0
  %10867 = vmatpush2.msra.mxu0 0.0
  %10868 = vmatprep.subr.mxu0 0.0
  %10869 = vmatpush2.msra.mxu0 0.0
  %10870 = vmatprep.subr.mxu0 0.0
  %10871 = vmatpush2.msra.mxu0 0.0
  %10872 = vmatprep.subr.mxu0 0.0
  %10873 = vmatpush2.msra.mxu0 0.0
  %10874 = vmatprep.subr.mxu0 0.0
  %10875 = vmatpush2.msra.mxu0 0.0
  %10876 = vmatprep.subr.mxu0 0.0
  %10877 = vmatpush2.msra.mxu0 0.0
  %10878 = vmatprep.subr.mxu0 0.0
  %10879 = vmatpush2.msra.mxu0 0.0
  %10880 = vmatprep.subr.mxu0 0.0
  %10881 = vmatpush2.msra.mxu0 0.0
  %10882 = vmatprep.subr.mxu0 0.0
  %10883 = vmatpush2.msra.mxu0 0.0
  %10884 = vmatprep.subr.mxu0 0.0
  %10885 = vmatpush2.msra.mxu0 0.0
  %10886 = vmatprep.subr.mxu0 0.0
  %10887 = vmatpush2.msra.mxu0 0.0
  %10888 = vmatprep.subr.mxu0 0.0
  %10889 = vmatpush2.msra.mxu0 0.0
  %10890 = vmatprep.subr.mxu0 0.0
  %10891 = vmatpush2.msra.mxu0 0.0
  %10892 = vmatprep.subr.mxu0 0.0
  %10893 = vmatpush2.msra.mxu0 0.0
  %10894 = vmatprep.subr.mxu0 0.0
  %10895 = vmatpush2.msra.mxu0 0.0
  %10896 = vmatprep.mubr.f32.mxu0 0.0
  %10897 = vmatmul.mubr.f32.gmra.mxu0 %v10830
  %v10898 = vpop.f32.mrf.mxu0
  %v10899 = vadd.f32 0.0, %v10898
  %v10900 = vpop.f32.mrf.mxu0
  %10901 = vdwg.mxu0
  %v10902 = vadd.f32 %v10825, %v10899
  %s10903 = scalar_lea.vmem %s6, 112
  %v10904 = vld [vmem:[%s10903] sm:$0xff]
  %v10905 = vld [vmem:[%s10903 + $0x8] sm:$0xff]
  %v10907 = vsel %vm10371, %v10337, 0
  %10909 = vmatprep.subr.mxu0 0.0
  %10910 = vmatpush1.msra.mxu0 0.0
  %10911 = vmatprep.subr.mxu0 0.0
  %10912 = vmatpush1.msra.mxu0 0.0
  %10913 = vmatprep.subr.mxu0 0.0
  %10914 = vmatpush1.msra.mxu0 0.0
  %10915 = vmatprep.subr.mxu0 0.0
  %10916 = vmatpush1.msra.mxu0 0.0
  %10917 = vmatprep.subr.mxu0 0.0
  %10918 = vmatpush1.msra.mxu0 0.0
  %10919 = vmatprep.subr.mxu0 0.0
  %10920 = vmatpush1.msra.mxu0 0.0
  %10921 = vmatprep.subr.mxu0 0.0
  %10922 = vmatpush1.msra.mxu0 0.0
  %10923 = vmatprep.subr.mxu0 0.0
  %10924 = vmatpush1.msra.mxu0 0.0
  %10925 = vmatprep.subr.mxu0 0.0
  %10926 = vmatpush1.msra.mxu0 0.0
  %10927 = vmatprep.subr.mxu0 0.0
  %10928 = vmatpush1.msra.mxu0 0.0
  %10929 = vmatprep.subr.mxu0 0.0
  %10930 = vmatpush1.msra.mxu0 0.0
  %10931 = vmatprep.subr.mxu0 0.0
  %10932 = vmatpush1.msra.mxu0 0.0
  %10933 = vmatprep.subr.mxu0 0.0
  %10934 = vmatpush1.msra.mxu0 0.0
  %10935 = vmatprep.subr.mxu0 0.0
  %10936 = vmatpush1.msra.mxu0 0.0
  %10937 = vmatprep.subr.mxu0 0.0
  %10938 = vmatpush1.msra.mxu0 %v10905
  %10939 = vmatprep.subr.mxu0 0.0
  %10940 = vmatpush1.msra.mxu0 %v10904
  %10941 = vmatprep.subr.mxu0 0.0
  %10942 = vmatpush2.msra.mxu0 0.0
  %10943 = vmatprep.subr.mxu0 0.0
  %10944 = vmatpush2.msra.mxu0 0.0
  %10945 = vmatprep.subr.mxu0 0.0
  %10946 = vmatpush2.msra.mxu0 0.0
  %10947 = vmatprep.subr.mxu0 0.0
  %10948 = vmatpush2.msra.mxu0 0.0
  %10949 = vmatprep.subr.mxu0 0.0
  %10950 = vmatpush2.msra.mxu0 0.0
  %10951 = vmatprep.subr.mxu0 0.0
  %10952 = vmatpush2.msra.mxu0 0.0
  %10953 = vmatprep.subr.mxu0 0.0
  %10954 = vmatpush2.msra.mxu0 0.0
  %10955 = vmatprep.subr.mxu0 0.0
  %10956 = vmatpush2.msra.mxu0 0.0
  %10957 = vmatprep.subr.mxu0 0.0
  %10958 = vmatpush2.msra.mxu0 0.0
  %10959 = vmatprep.subr.mxu0 0.0
  %10960 = vmatpush2.msra.mxu0 0.0
  %10961 = vmatprep.subr.mxu0 0.0
  %10962 = vmatpush2.msra.mxu0 0.0
  %10963 = vmatprep.subr.mxu0 0.0
  %10964 = vmatpush2.msra.mxu0 0.0
  %10965 = vmatprep.subr.mxu0 0.0
  %10966 = vmatpush2.msra.mxu0 0.0
  %10967 = vmatprep.subr.mxu0 0.0
  %10968 = vmatpush2.msra.mxu0 0.0
  %10969 = vmatprep.subr.mxu0 0.0
  %10970 = vmatpush2.msra.mxu0 0.0
  %10971 = vmatprep.subr.mxu0 0.0
  %10972 = vmatpush2.msra.mxu0 0.0
  %10973 = vmatprep.mubr.f32.mxu0 0.0
  %10974 = vmatmul.mubr.f32.gmra.mxu0 %v10907
  %v10975 = vpop.f32.mrf.mxu0
  %v10976 = vadd.f32 0.0, %v10975
  %v10977 = vpop.f32.mrf.mxu0
  %10978 = vdwg.mxu0
  %v10979 = vadd.f32 %v10902, %v10976
  %s10980 = scalar_lea.vmem %s6, 128
  %v10981 = vld [vmem:[%s10980] sm:$0xff]
  %v10982 = vld [vmem:[%s10980 + $0x8] sm:$0xff]
  %v10984 = vsel %vm10371, %v10338, 0
  %10986 = vmatprep.subr.mxu0 0.0
  %10987 = vmatpush1.msra.mxu0 0.0
  %10988 = vmatprep.subr.mxu0 0.0
  %10989 = vmatpush1.msra.mxu0 0.0
  %10990 = vmatprep.subr.mxu0 0.0
  %10991 = vmatpush1.msra.mxu0 0.0
  %10992 = vmatprep.subr.mxu0 0.0
  %10993 = vmatpush1.msra.mxu0 0.0
  %10994 = vmatprep.subr.mxu0 0.0
  %10995 = vmatpush1.msra.mxu0 0.0
  %10996 = vmatprep.subr.mxu0 0.0
  %10997 = vmatpush1.msra.mxu0 0.0
  %10998 = vmatprep.subr.mxu0 0.0
  %10999 = vmatpush1.msra.mxu0 0.0
  %11000 = vmatprep.subr.mxu0 0.0
  %11001 = vmatpush1.msra.mxu0 0.0
  %11002 = vmatprep.subr.mxu0 0.0
  %11003 = vmatpush1.msra.mxu0 0.0
  %11004 = vmatprep.subr.mxu0 0.0
  %11005 = vmatpush1.msra.mxu0 0.0
  %11006 = vmatprep.subr.mxu0 0.0
  %11007 = vmatpush1.msra.mxu0 0.0
  %11008 = vmatprep.subr.mxu0 0.0
  %11009 = vmatpush1.msra.mxu0 0.0
  %11010 = vmatprep.subr.mxu0 0.0
  %11011 = vmatpush1.msra.mxu0 0.0
  %11012 = vmatprep.subr.mxu0 0.0
  %11013 = vmatpush1.msra.mxu0 0.0
  %11014 = vmatprep.subr.mxu0 0.0
  %11015 = vmatpush1.msra.mxu0 %v10982
  %11016 = vmatprep.subr.mxu0 0.0
  %11017 = vmatpush1.msra.mxu0 %v10981
  %11018 = vmatprep.subr.mxu0 0.0
  %11019 = vmatpush2.msra.mxu0 0.0
  %11020 = vmatprep.subr.mxu0 0.0
  %11021 = vmatpush2.msra.mxu0 0.0
  %11022 = vmatprep.subr.mxu0 0.0
  %11023 = vmatpush2.msra.mxu0 0.0
  %11024 = vmatprep.subr.mxu0 0.0
  %11025 = vmatpush2.msra.mxu0 0.0
  %11026 = vmatprep.subr.mxu0 0.0
  %11027 = vmatpush2.msra.mxu0 0.0
  %11028 = vmatprep.subr.mxu0 0.0
  %11029 = vmatpush2.msra.mxu0 0.0
  %11030 = vmatprep.subr.mxu0 0.0
  %11031 = vmatpush2.msra.mxu0 0.0
  %11032 = vmatprep.subr.mxu0 0.0
  %11033 = vmatpush2.msra.mxu0 0.0
  %11034 = vmatprep.subr.mxu0 0.0
  %11035 = vmatpush2.msra.mxu0 0.0
  %11036 = vmatprep.subr.mxu0 0.0
  %11037 = vmatpush2.msra.mxu0 0.0
  %11038 = vmatprep.subr.mxu0 0.0
  %11039 = vmatpush2.msra.mxu0 0.0
  %11040 = vmatprep.subr.mxu0 0.0
  %11041 = vmatpush2.msra.mxu0 0.0
  %11042 = vmatprep.subr.mxu0 0.0
  %11043 = vmatpush2.msra.mxu0 0.0
  %11044 = vmatprep.subr.mxu0 0.0
  %11045 = vmatpush2.msra.mxu0 0.0
  %11046 = vmatprep.subr.mxu0 0.0
  %11047 = vmatpush2.msra.mxu0 0.0
  %11048 = vmatprep.subr.mxu0 0.0
  %11049 = vmatpush2.msra.mxu0 0.0
  %11050 = vmatprep.mubr.f32.mxu0 0.0
  %11051 = vmatmul.mubr.f32.gmra.mxu0 %v10984
  %v11052 = vpop.f32.mrf.mxu0
  %v11053 = vadd.f32 0.0, %v11052
  %v11054 = vpop.f32.mrf.mxu0
  %11055 = vdwg.mxu0
  %v11056 = vadd.f32 %v10979, %v11053
  %s11057 = scalar_lea.vmem %s6, 144
  %v11058 = vld [vmem:[%s11057] sm:$0xff]
  %v11059 = vld [vmem:[%s11057 + $0x8] sm:$0xff]
  %v11061 = vsel %vm10371, %v10339, 0
  %11063 = vmatprep.subr.mxu0 0.0
  %11064 = vmatpush1.msra.mxu0 0.0
  %11065 = vmatprep.subr.mxu0 0.0
  %11066 = vmatpush1.msra.mxu0 0.0
  %11067 = vmatprep.subr.mxu0 0.0
  %11068 = vmatpush1.msra.mxu0 0.0
  %11069 = vmatprep.subr.mxu0 0.0
  %11070 = vmatpush1.msra.mxu0 0.0
  %11071 = vmatprep.subr.mxu0 0.0
  %11072 = vmatpush1.msra.mxu0 0.0
  %11073 = vmatprep.subr.mxu0 0.0
  %11074 = vmatpush1.msra.mxu0 0.0
  %11075 = vmatprep.subr.mxu0 0.0
  %11076 = vmatpush1.msra.mxu0 0.0
  %11077 = vmatprep.subr.mxu0 0.0
  %11078 = vmatpush1.msra.mxu0 0.0
  %11079 = vmatprep.subr.mxu0 0.0
  %11080 = vmatpush1.msra.mxu0 0.0
  %11081 = vmatprep.subr.mxu0 0.0
  %11082 = vmatpush1.msra.mxu0 0.0
  %11083 = vmatprep.subr.mxu0 0.0
  %11084 = vmatpush1.msra.mxu0 0.0
  %11085 = vmatprep.subr.mxu0 0.0
  %11086 = vmatpush1.msra.mxu0 0.0
  %11087 = vmatprep.subr.mxu0 0.0
  %11088 = vmatpush1.msra.mxu0 0.0
  %11089 = vmatprep.subr.mxu0 0.0
  %11090 = vmatpush1.msra.mxu0 0.0
  %11091 = vmatprep.subr.mxu0 0.0
  %11092 = vmatpush1.msra.mxu0 %v11059
  %11093 = vmatprep.subr.mxu0 0.0
  %11094 = vmatpush1.msra.mxu0 %v11058
  %11095 = vmatprep.subr.mxu0 0.0
  %11096 = vmatpush2.msra.mxu0 0.0
  %11097 = vmatprep.subr.mxu0 0.0
  %11098 = vmatpush2.msra.mxu0 0.0
  %11099 = vmatprep.subr.mxu0 0.0
  %11100 = vmatpush2.msra.mxu0 0.0
  %11101 = vmatprep.subr.mxu0 0.0
  %11102 = vmatpush2.msra.mxu0 0.0
  %11103 = vmatprep.subr.mxu0 0.0
  %11104 = vmatpush2.msra.mxu0 0.0
  %11105 = vmatprep.subr.mxu0 0.0
  %11106 = vmatpush2.msra.mxu0 0.0
  %11107 = vmatprep.subr.mxu0 0.0
  %11108 = vmatpush2.msra.mxu0 0.0
  %11109 = vmatprep.subr.mxu0 0.0
  %11110 = vmatpush2.msra.mxu0 0.0
  %11111 = vmatprep.subr.mxu0 0.0
  %11112 = vmatpush2.msra.mxu0 0.0
  %11113 = vmatprep.subr.mxu0 0.0
  %11114 = vmatpush2.msra.mxu0 0.0
  %11115 = vmatprep.subr.mxu0 0.0
  %11116 = vmatpush2.msra.mxu0 0.0
  %11117 = vmatprep.subr.mxu0 0.0
  %11118 = vmatpush2.msra.mxu0 0.0
  %11119 = vmatprep.subr.mxu0 0.0
  %11120 = vmatpush2.msra.mxu0 0.0
  %11121 = vmatprep.subr.mxu0 0.0
  %11122 = vmatpush2.msra.mxu0 0.0
  %11123 = vmatprep.subr.mxu0 0.0
  %11124 = vmatpush2.msra.mxu0 0.0
  %11125 = vmatprep.subr.mxu0 0.0
  %11126 = vmatpush2.msra.mxu0 0.0
  %11127 = vmatprep.mubr.f32.mxu0 0.0
  %11128 = vmatmul.mubr.f32.gmra.mxu0 %v11061
  %v11129 = vpop.f32.mrf.mxu0
  %v11130 = vadd.f32 0.0, %v11129
  %v11131 = vpop.f32.mrf.mxu0
  %11132 = vdwg.mxu0
  %v11133 = vadd.f32 %v11056, %v11130
  %s11134 = scalar_lea.vmem %s6, 160
  %v11135 = vld [vmem:[%s11134] sm:$0xff]
  %v11136 = vld [vmem:[%s11134 + $0x8] sm:$0xff]
  %v11138 = vsel %vm10371, %v10340, 0
  %11140 = vmatprep.subr.mxu0 0.0
  %11141 = vmatpush1.msra.mxu0 0.0
  %11142 = vmatprep.subr.mxu0 0.0
  %11143 = vmatpush1.msra.mxu0 0.0
  %11144 = vmatprep.subr.mxu0 0.0
  %11145 = vmatpush1.msra.mxu0 0.0
  %11146 = vmatprep.subr.mxu0 0.0
  %11147 = vmatpush1.msra.mxu0 0.0
  %11148 = vmatprep.subr.mxu0 0.0
  %11149 = vmatpush1.msra.mxu0 0.0
  %11150 = vmatprep.subr.mxu0 0.0
  %11151 = vmatpush1.msra.mxu0 0.0
  %11152 = vmatprep.subr.mxu0 0.0
  %11153 = vmatpush1.msra.mxu0 0.0
  %11154 = vmatprep.subr.mxu0 0.0
  %11155 = vmatpush1.msra.mxu0 0.0
  %11156 = vmatprep.subr.mxu0 0.0
  %11157 = vmatpush1.msra.mxu0 0.0
  %11158 = vmatprep.subr.mxu0 0.0
  %11159 = vmatpush1.msra.mxu0 0.0
  %11160 = vmatprep.subr.mxu0 0.0
  %11161 = vmatpush1.msra.mxu0 0.0
  %11162 = vmatprep.subr.mxu0 0.0
  %11163 = vmatpush1.msra.mxu0 0.0
  %11164 = vmatprep.subr.mxu0 0.0
  %11165 = vmatpush1.msra.mxu0 0.0
  %11166 = vmatprep.subr.mxu0 0.0
  %11167 = vmatpush1.msra.mxu0 0.0
  %11168 = vmatprep.subr.mxu0 0.0
  %11169 = vmatpush1.msra.mxu0 %v11136
  %11170 = vmatprep.subr.mxu0 0.0
  %11171 = vmatpush1.msra.mxu0 %v11135
  %11172 = vmatprep.subr.mxu0 0.0
  %11173 = vmatpush2.msra.mxu0 0.0
  %11174 = vmatprep.subr.mxu0 0.0
  %11175 = vmatpush2.msra.mxu0 0.0
  %11176 = vmatprep.subr.mxu0 0.0
  %11177 = vmatpush2.msra.mxu0 0.0
  %11178 = vmatprep.subr.mxu0 0.0
  %11179 = vmatpush2.msra.mxu0 0.0
  %11180 = vmatprep.subr.mxu0 0.0
  %11181 = vmatpush2.msra.mxu0 0.0
  %11182 = vmatprep.subr.mxu0 0.0
  %11183 = vmatpush2.msra.mxu0 0.0
  %11184 = vmatprep.subr.mxu0 0.0
  %11185 = vmatpush2.msra.mxu0 0.0
  %11186 = vmatprep.subr.mxu0 0.0
  %11187 = vmatpush2.msra.mxu0 0.0
  %11188 = vmatprep.subr.mxu0 0.0
  %11189 = vmatpush2.msra.mxu0 0.0
  %11190 = vmatprep.subr.mxu0 0.0
  %11191 = vmatpush2.msra.mxu0 0.0
  %11192 = vmatprep.subr.mxu0 0.0
  %11193 = vmatpush2.msra.mxu0 0.0
  %11194 = vmatprep.subr.mxu0 0.0
  %11195 = vmatpush2.msra.mxu0 0.0
  %11196 = vmatprep.subr.mxu0 0.0
  %11197 = vmatpush2.msra.mxu0 0.0
  %11198 = vmatprep.subr.mxu0 0.0
  %11199 = vmatpush2.msra.mxu0 0.0
  %11200 = vmatprep.subr.mxu0 0.0
  %11201 = vmatpush2.msra.mxu0 0.0
  %11202 = vmatprep.subr.mxu0 0.0
  %11203 = vmatpush2.msra.mxu0 0.0
  %11204 = vmatprep.mubr.f32.mxu0 0.0
  %11205 = vmatmul.mubr.f32.gmra.mxu0 %v11138
  %v11206 = vpop.f32.mrf.mxu0
  %v11207 = vadd.f32 0.0, %v11206
  %v11208 = vpop.f32.mrf.mxu0
  %11209 = vdwg.mxu0
  %v11210 = vadd.f32 %v11133, %v11207
  %s11211 = scalar_lea.vmem %s6, 176
  %v11212 = vld [vmem:[%s11211] sm:$0xff]
  %v11213 = vld [vmem:[%s11211 + $0x8] sm:$0xff]
  %v11215 = vsel %vm10371, %v10341, 0
  %11217 = vmatprep.subr.mxu0 0.0
  %11218 = vmatpush1.msra.mxu0 0.0
  %11219 = vmatprep.subr.mxu0 0.0
  %11220 = vmatpush1.msra.mxu0 0.0
  %11221 = vmatprep.subr.mxu0 0.0
  %11222 = vmatpush1.msra.mxu0 0.0
  %11223 = vmatprep.subr.mxu0 0.0
  %11224 = vmatpush1.msra.mxu0 0.0
  %11225 = vmatprep.subr.mxu0 0.0
  %11226 = vmatpush1.msra.mxu0 0.0
  %11227 = vmatprep.subr.mxu0 0.0
  %11228 = vmatpush1.msra.mxu0 0.0
  %11229 = vmatprep.subr.mxu0 0.0
  %11230 = vmatpush1.msra.mxu0 0.0
  %11231 = vmatprep.subr.mxu0 0.0
  %11232 = vmatpush1.msra.mxu0 0.0
  %11233 = vmatprep.subr.mxu0 0.0
  %11234 = vmatpush1.msra.mxu0 0.0
  %11235 = vmatprep.subr.mxu0 0.0
  %11236 = vmatpush1.msra.mxu0 0.0
  %11237 = vmatprep.subr.mxu0 0.0
  %11238 = vmatpush1.msra.mxu0 0.0
  %11239 = vmatprep.subr.mxu0 0.0
  %11240 = vmatpush1.msra.mxu0 0.0
  %11241 = vmatprep.subr.mxu0 0.0
  %11242 = vmatpush1.msra.mxu0 0.0
  %11243 = vmatprep.subr.mxu0 0.0
  %11244 = vmatpush1.msra.mxu0 0.0
  %11245 = vmatprep.subr.mxu0 0.0
  %11246 = vmatpush1.msra.mxu0 %v11213
  %11247 = vmatprep.subr.mxu0 0.0
  %11248 = vmatpush1.msra.mxu0 %v11212
  %11249 = vmatprep.subr.mxu0 0.0
  %11250 = vmatpush2.msra.mxu0 0.0
  %11251 = vmatprep.subr.mxu0 0.0
  %11252 = vmatpush2.msra.mxu0 0.0
  %11253 = vmatprep.subr.mxu0 0.0
  %11254 = vmatpush2.msra.mxu0 0.0
  %11255 = vmatprep.subr.mxu0 0.0
  %11256 = vmatpush2.msra.mxu0 0.0
  %11257 = vmatprep.subr.mxu0 0.0
  %11258 = vmatpush2.msra.mxu0 0.0
  %11259 = vmatprep.subr.mxu0 0.0
  %11260 = vmatpush2.msra.mxu0 0.0
  %11261 = vmatprep.subr.mxu0 0.0
  %11262 = vmatpush2.msra.mxu0 0.0
  %11263 = vmatprep.subr.mxu0 0.0
  %11264 = vmatpush2.msra.mxu0 0.0
  %11265 = vmatprep.subr.mxu0 0.0
  %11266 = vmatpush2.msra.mxu0 0.0
  %11267 = vmatprep.subr.mxu0 0.0
  %11268 = vmatpush2.msra.mxu0 0.0
  %11269 = vmatprep.subr.mxu0 0.0
  %11270 = vmatpush2.msra.mxu0 0.0
  %11271 = vmatprep.subr.mxu0 0.0
  %11272 = vmatpush2.msra.mxu0 0.0
  %11273 = vmatprep.subr.mxu0 0.0
  %11274 = vmatpush2.msra.mxu0 0.0
  %11275 = vmatprep.subr.mxu0 0.0
  %11276 = vmatpush2.msra.mxu0 0.0
  %11277 = vmatprep.subr.mxu0 0.0
  %11278 = vmatpush2.msra.mxu0 0.0
  %11279 = vmatprep.subr.mxu0 0.0
  %11280 = vmatpush2.msra.mxu0 0.0
  %11281 = vmatprep.mubr.f32.mxu0 0.0
  %11282 = vmatmul.mubr.f32.gmra.mxu0 %v11215
  %v11283 = vpop.f32.mrf.mxu0
  %v11284 = vadd.f32 0.0, %v11283
  %v11285 = vpop.f32.mrf.mxu0
  %11286 = vdwg.mxu0
  %v11287 = vadd.f32 %v11210, %v11284
  %s11288 = scalar_lea.vmem %s6, 192
  %v11289 = vld [vmem:[%s11288] sm:$0xff]
  %v11290 = vld [vmem:[%s11288 + $0x8] sm:$0xff]
  %v11292 = vsel %vm10371, %v10342, 0
  %11294 = vmatprep.subr.mxu0 0.0
  %11295 = vmatpush1.msra.mxu0 0.0
  %11296 = vmatprep.subr.mxu0 0.0
  %11297 = vmatpush1.msra.mxu0 0.0
  %11298 = vmatprep.subr.mxu0 0.0
  %11299 = vmatpush1.msra.mxu0 0.0
  %11300 = vmatprep.subr.mxu0 0.0
  %11301 = vmatpush1.msra.mxu0 0.0
  %11302 = vmatprep.subr.mxu0 0.0
  %11303 = vmatpush1.msra.mxu0 0.0
  %11304 = vmatprep.subr.mxu0 0.0
  %11305 = vmatpush1.msra.mxu0 0.0
  %11306 = vmatprep.subr.mxu0 0.0
  %11307 = vmatpush1.msra.mxu0 0.0
  %11308 = vmatprep.subr.mxu0 0.0
  %11309 = vmatpush1.msra.mxu0 0.0
  %11310 = vmatprep.subr.mxu0 0.0
  %11311 = vmatpush1.msra.mxu0 0.0
  %11312 = vmatprep.subr.mxu0 0.0
  %11313 = vmatpush1.msra.mxu0 0.0
  %11314 = vmatprep.subr.mxu0 0.0
  %11315 = vmatpush1.msra.mxu0 0.0
  %11316 = vmatprep.subr.mxu0 0.0
  %11317 = vmatpush1.msra.mxu0 0.0
  %11318 = vmatprep.subr.mxu0 0.0
  %11319 = vmatpush1.msra.mxu0 0.0
  %11320 = vmatprep.subr.mxu0 0.0
  %11321 = vmatpush1.msra.mxu0 0.0
  %11322 = vmatprep.subr.mxu0 0.0
  %11323 = vmatpush1.msra.mxu0 %v11290
  %11324 = vmatprep.subr.mxu0 0.0
  %11325 = vmatpush1.msra.mxu0 %v11289
  %11326 = vmatprep.subr.mxu0 0.0
  %11327 = vmatpush2.msra.mxu0 0.0
  %11328 = vmatprep.subr.mxu0 0.0
  %11329 = vmatpush2.msra.mxu0 0.0
  %11330 = vmatprep.subr.mxu0 0.0
  %11331 = vmatpush2.msra.mxu0 0.0
  %11332 = vmatprep.subr.mxu0 0.0
  %11333 = vmatpush2.msra.mxu0 0.0
  %11334 = vmatprep.subr.mxu0 0.0
  %11335 = vmatpush2.msra.mxu0 0.0
  %11336 = vmatprep.subr.mxu0 0.0
  %11337 = vmatpush2.msra.mxu0 0.0
  %11338 = vmatprep.subr.mxu0 0.0
  %11339 = vmatpush2.msra.mxu0 0.0
  %11340 = vmatprep.subr.mxu0 0.0
  %11341 = vmatpush2.msra.mxu0 0.0
  %11342 = vmatprep.subr.mxu0 0.0
  %11343 = vmatpush2.msra.mxu0 0.0
  %11344 = vmatprep.subr.mxu0 0.0
  %11345 = vmatpush2.msra.mxu0 0.0
  %11346 = vmatprep.subr.mxu0 0.0
  %11347 = vmatpush2.msra.mxu0 0.0
  %11348 = vmatprep.subr.mxu0 0.0
  %11349 = vmatpush2.msra.mxu0 0.0
  %11350 = vmatprep.subr.mxu0 0.0
  %11351 = vmatpush2.msra.mxu0 0.0
  %11352 = vmatprep.subr.mxu0 0.0
  %11353 = vmatpush2.msra.mxu0 0.0
  %11354 = vmatprep.subr.mxu0 0.0
  %11355 = vmatpush2.msra.mxu0 0.0
  %11356 = vmatprep.subr.mxu0 0.0
  %11357 = vmatpush2.msra.mxu0 0.0
  %11358 = vmatprep.mubr.f32.mxu0 0.0
  %11359 = vmatmul.mubr.f32.gmra.mxu0 %v11292
  %v11360 = vpop.f32.mrf.mxu0
  %v11361 = vadd.f32 0.0, %v11360
  %v11362 = vpop.f32.mrf.mxu0
  %11363 = vdwg.mxu0
  %v11364 = vadd.f32 %v11287, %v11361
  %s11365 = scalar_lea.vmem %s6, 208
  %v11366 = vld [vmem:[%s11365] sm:$0xff]
  %v11367 = vld [vmem:[%s11365 + $0x8] sm:$0xff]
  %v11369 = vsel %vm10371, %v10343, 0
  %11371 = vmatprep.subr.mxu0 0.0
  %11372 = vmatpush1.msra.mxu0 0.0
  %11373 = vmatprep.subr.mxu0 0.0
  %11374 = vmatpush1.msra.mxu0 0.0
  %11375 = vmatprep.subr.mxu0 0.0
  %11376 = vmatpush1.msra.mxu0 0.0
  %11377 = vmatprep.subr.mxu0 0.0
  %11378 = vmatpush1.msra.mxu0 0.0
  %11379 = vmatprep.subr.mxu0 0.0
  %11380 = vmatpush1.msra.mxu0 0.0
  %11381 = vmatprep.subr.mxu0 0.0
  %11382 = vmatpush1.msra.mxu0 0.0
  %11383 = vmatprep.subr.mxu0 0.0
  %11384 = vmatpush1.msra.mxu0 0.0
  %11385 = vmatprep.subr.mxu0 0.0
  %11386 = vmatpush1.msra.mxu0 0.0
  %11387 = vmatprep.subr.mxu0 0.0
  %11388 = vmatpush1.msra.mxu0 0.0
  %11389 = vmatprep.subr.mxu0 0.0
  %11390 = vmatpush1.msra.mxu0 0.0
  %11391 = vmatprep.subr.mxu0 0.0
  %11392 = vmatpush1.msra.mxu0 0.0
  %11393 = vmatprep.subr.mxu0 0.0
  %11394 = vmatpush1.msra.mxu0 0.0
  %11395 = vmatprep.subr.mxu0 0.0
  %11396 = vmatpush1.msra.mxu0 0.0
  %11397 = vmatprep.subr.mxu0 0.0
  %11398 = vmatpush1.msra.mxu0 0.0
  %11399 = vmatprep.subr.mxu0 0.0
  %11400 = vmatpush1.msra.mxu0 %v11367
  %11401 = vmatprep.subr.mxu0 0.0
  %11402 = vmatpush1.msra.mxu0 %v11366
  %11403 = vmatprep.subr.mxu0 0.0
  %11404 = vmatpush2.msra.mxu0 0.0
  %11405 = vmatprep.subr.mxu0 0.0
  %11406 = vmatpush2.msra.mxu0 0.0
  %11407 = vmatprep.subr.mxu0 0.0
  %11408 = vmatpush2.msra.mxu0 0.0
  %11409 = vmatprep.subr.mxu0 0.0
  %11410 = vmatpush2.msra.mxu0 0.0
  %11411 = vmatprep.subr.mxu0 0.0
  %11412 = vmatpush2.msra.mxu0 0.0
  %11413 = vmatprep.subr.mxu0 0.0
  %11414 = vmatpush2.msra.mxu0 0.0
  %11415 = vmatprep.subr.mxu0 0.0
  %11416 = vmatpush2.msra.mxu0 0.0
  %11417 = vmatprep.subr.mxu0 0.0
  %11418 = vmatpush2.msra.mxu0 0.0
  %11419 = vmatprep.subr.mxu0 0.0
  %11420 = vmatpush2.msra.mxu0 0.0
  %11421 = vmatprep.subr.mxu0 0.0
  %11422 = vmatpush2.msra.mxu0 0.0
  %11423 = vmatprep.subr.mxu0 0.0
  %11424 = vmatpush2.msra.mxu0 0.0
  %11425 = vmatprep.subr.mxu0 0.0
  %11426 = vmatpush2.msra.mxu0 0.0
  %11427 = vmatprep.subr.mxu0 0.0
  %11428 = vmatpush2.msra.mxu0 0.0
  %11429 = vmatprep.subr.mxu0 0.0
  %11430 = vmatpush2.msra.mxu0 0.0
  %11431 = vmatprep.subr.mxu0 0.0
  %11432 = vmatpush2.msra.mxu0 0.0
  %11433 = vmatprep.subr.mxu0 0.0
  %11434 = vmatpush2.msra.mxu0 0.0
  %11435 = vmatprep.mubr.f32.mxu0 0.0
  %11436 = vmatmul.mubr.f32.gmra.mxu0 %v11369
  %v11437 = vpop.f32.mrf.mxu0
  %v11438 = vadd.f32 0.0, %v11437
  %v11439 = vpop.f32.mrf.mxu0
  %11440 = vdwg.mxu0
  %v11441 = vadd.f32 %v11364, %v11438
  %s11442 = scalar_lea.vmem %s6, 224
  %v11443 = vld [vmem:[%s11442] sm:$0xff]
  %v11444 = vld [vmem:[%s11442 + $0x8] sm:$0xff]
  %v11446 = vsel %vm10371, %v10344, 0
  %11448 = vmatprep.subr.mxu0 0.0
  %11449 = vmatpush1.msra.mxu0 0.0
  %11450 = vmatprep.subr.mxu0 0.0
  %11451 = vmatpush1.msra.mxu0 0.0
  %11452 = vmatprep.subr.mxu0 0.0
  %11453 = vmatpush1.msra.mxu0 0.0
  %11454 = vmatprep.subr.mxu0 0.0
  %11455 = vmatpush1.msra.mxu0 0.0
  %11456 = vmatprep.subr.mxu0 0.0
  %11457 = vmatpush1.msra.mxu0 0.0
  %11458 = vmatprep.subr.mxu0 0.0
  %11459 = vmatpush1.msra.mxu0 0.0
  %11460 = vmatprep.subr.mxu0 0.0
  %11461 = vmatpush1.msra.mxu0 0.0
  %11462 = vmatprep.subr.mxu0 0.0
  %11463 = vmatpush1.msra.mxu0 0.0
  %11464 = vmatprep.subr.mxu0 0.0
  %11465 = vmatpush1.msra.mxu0 0.0
  %11466 = vmatprep.subr.mxu0 0.0
  %11467 = vmatpush1.msra.mxu0 0.0
  %11468 = vmatprep.subr.mxu0 0.0
  %11469 = vmatpush1.msra.mxu0 0.0
  %11470 = vmatprep.subr.mxu0 0.0
  %11471 = vmatpush1.msra.mxu0 0.0
  %11472 = vmatprep.subr.mxu0 0.0
  %11473 = vmatpush1.msra.mxu0 0.0
  %11474 = vmatprep.subr.mxu0 0.0
  %11475 = vmatpush1.msra.mxu0 0.0
  %11476 = vmatprep.subr.mxu0 0.0
  %11477 = vmatpush1.msra.mxu0 %v11444
  %11478 = vmatprep.subr.mxu0 0.0
  %11479 = vmatpush1.msra.mxu0 %v11443
  %11480 = vmatprep.subr.mxu0 0.0
  %11481 = vmatpush2.msra.mxu0 0.0
  %11482 = vmatprep.subr.mxu0 0.0
  %11483 = vmatpush2.msra.mxu0 0.0
  %11484 = vmatprep.subr.mxu0 0.0
  %11485 = vmatpush2.msra.mxu0 0.0
  %11486 = vmatprep.subr.mxu0 0.0
  %11487 = vmatpush2.msra.mxu0 0.0
  %11488 = vmatprep.subr.mxu0 0.0
  %11489 = vmatpush2.msra.mxu0 0.0
  %11490 = vmatprep.subr.mxu0 0.0
  %11491 = vmatpush2.msra.mxu0 0.0
  %11492 = vmatprep.subr.mxu0 0.0
  %11493 = vmatpush2.msra.mxu0 0.0
  %11494 = vmatprep.subr.mxu0 0.0
  %11495 = vmatpush2.msra.mxu0 0.0
  %11496 = vmatprep.subr.mxu0 0.0
  %11497 = vmatpush2.msra.mxu0 0.0
  %11498 = vmatprep.subr.mxu0 0.0
  %11499 = vmatpush2.msra.mxu0 0.0
  %11500 = vmatprep.subr.mxu0 0.0
  %11501 = vmatpush2.msra.mxu0 0.0
  %11502 = vmatprep.subr.mxu0 0.0
  %11503 = vmatpush2.msra.mxu0 0.0
  %11504 = vmatprep.subr.mxu0 0.0
  %11505 = vmatpush2.msra.mxu0 0.0
  %11506 = vmatprep.subr.mxu0 0.0
  %11507 = vmatpush2.msra.mxu0 0.0
  %11508 = vmatprep.subr.mxu0 0.0
  %11509 = vmatpush2.msra.mxu0 0.0
  %11510 = vmatprep.subr.mxu0 0.0
  %11511 = vmatpush2.msra.mxu0 0.0
  %11512 = vmatprep.mubr.f32.mxu0 0.0
  %11513 = vmatmul.mubr.f32.gmra.mxu0 %v11446
  %v11514 = vpop.f32.mrf.mxu0
  %v11515 = vadd.f32 0.0, %v11514
  %v11516 = vpop.f32.mrf.mxu0
  %11517 = vdwg.mxu0
  %v11518 = vadd.f32 %v11441, %v11515
  %s11519 = scalar_lea.vmem %s6, 240
  %v11520 = vld [vmem:[%s11519] sm:$0xff]
  %v11521 = vld [vmem:[%s11519 + $0x8] sm:$0xff]
  %v11523 = vsel %vm10371, %v10345, 0
  %11525 = vmatprep.subr.mxu0 0.0
  %11526 = vmatpush1.msra.mxu0 0.0
  %11527 = vmatprep.subr.mxu0 0.0
  %11528 = vmatpush1.msra.mxu0 0.0
  %11529 = vmatprep.subr.mxu0 0.0
  %11530 = vmatpush1.msra.mxu0 0.0
  %11531 = vmatprep.subr.mxu0 0.0
  %11532 = vmatpush1.msra.mxu0 0.0
  %11533 = vmatprep.subr.mxu0 0.0
  %11534 = vmatpush1.msra.mxu0 0.0
  %11535 = vmatprep.subr.mxu0 0.0
  %11536 = vmatpush1.msra.mxu0 0.0
  %11537 = vmatprep.subr.mxu0 0.0
  %11538 = vmatpush1.msra.mxu0 0.0
  %11539 = vmatprep.subr.mxu0 0.0
  %11540 = vmatpush1.msra.mxu0 0.0
  %11541 = vmatprep.subr.mxu0 0.0
  %11542 = vmatpush1.msra.mxu0 0.0
  %11543 = vmatprep.subr.mxu0 0.0
  %11544 = vmatpush1.msra.mxu0 0.0
  %11545 = vmatprep.subr.mxu0 0.0
  %11546 = vmatpush1.msra.mxu0 0.0
  %11547 = vmatprep.subr.mxu0 0.0
  %11548 = vmatpush1.msra.mxu0 0.0
  %11549 = vmatprep.subr.mxu0 0.0
  %11550 = vmatpush1.msra.mxu0 0.0
  %11551 = vmatprep.subr.mxu0 0.0
  %11552 = vmatpush1.msra.mxu0 0.0
  %11553 = vmatprep.subr.mxu0 0.0
  %11554 = vmatpush1.msra.mxu0 %v11521
  %11555 = vmatprep.subr.mxu0 0.0
  %11556 = vmatpush1.msra.mxu0 %v11520
  %11557 = vmatprep.subr.mxu0 0.0
  %11558 = vmatpush2.msra.mxu0 0.0
  %11559 = vmatprep.subr.mxu0 0.0
  %11560 = vmatpush2.msra.mxu0 0.0
  %11561 = vmatprep.subr.mxu0 0.0
  %11562 = vmatpush2.msra.mxu0 0.0
  %11563 = vmatprep.subr.mxu0 0.0
  %11564 = vmatpush2.msra.mxu0 0.0
  %11565 = vmatprep.subr.mxu0 0.0
  %11566 = vmatpush2.msra.mxu0 0.0
  %11567 = vmatprep.subr.mxu0 0.0
  %11568 = vmatpush2.msra.mxu0 0.0
  %11569 = vmatprep.subr.mxu0 0.0
  %11570 = vmatpush2.msra.mxu0 0.0
  %11571 = vmatprep.subr.mxu0 0.0
  %11572 = vmatpush2.msra.mxu0 0.0
  %11573 = vmatprep.subr.mxu0 0.0
  %11574 = vmatpush2.msra.mxu0 0.0
  %11575 = vmatprep.subr.mxu0 0.0
  %11576 = vmatpush2.msra.mxu0 0.0
  %11577 = vmatprep.subr.mxu0 0.0
  %11578 = vmatpush2.msra.mxu0 0.0
  %11579 = vmatprep.subr.mxu0 0.0
  %11580 = vmatpush2.msra.mxu0 0.0
  %11581 = vmatprep.subr.mxu0 0.0
  %11582 = vmatpush2.msra.mxu0 0.0
  %11583 = vmatprep.subr.mxu0 0.0
  %11584 = vmatpush2.msra.mxu0 0.0
  %11585 = vmatprep.subr.mxu0 0.0
  %11586 = vmatpush2.msra.mxu0 0.0
  %11587 = vmatprep.subr.mxu0 0.0
  %11588 = vmatpush2.msra.mxu0 0.0
  %11589 = vmatprep.mubr.f32.mxu0 0.0
  %11590 = vmatmul.mubr.f32.gmra.mxu0 %v11523
  %v11591 = vpop.f32.mrf.mxu0
  %v11592 = vadd.f32 0.0, %v11591
  %v11593 = vpop.f32.mrf.mxu0
  %11594 = vdwg.mxu0
  %v11595 = vadd.f32 %v11518, %v11592
  %s11596 = scalar_lea.vmem %s6, 256
  %v11597 = vld [vmem:[%s11596] sm:$0xff]
  %v11598 = vld [vmem:[%s11596 + $0x8] sm:$0xff]
  %v11600 = vsel %vm10371, %v10346, 0
  %11602 = vmatprep.subr.mxu0 0.0
  %11603 = vmatpush1.msra.mxu0 0.0
  %11604 = vmatprep.subr.mxu0 0.0
  %11605 = vmatpush1.msra.mxu0 0.0
  %11606 = vmatprep.subr.mxu0 0.0
  %11607 = vmatpush1.msra.mxu0 0.0
  %11608 = vmatprep.subr.mxu0 0.0
  %11609 = vmatpush1.msra.mxu0 0.0
  %11610 = vmatprep.subr.mxu0 0.0
  %11611 = vmatpush1.msra.mxu0 0.0
  %11612 = vmatprep.subr.mxu0 0.0
  %11613 = vmatpush1.msra.mxu0 0.0
  %11614 = vmatprep.subr.mxu0 0.0
  %11615 = vmatpush1.msra.mxu0 0.0
  %11616 = vmatprep.subr.mxu0 0.0
  %11617 = vmatpush1.msra.mxu0 0.0
  %11618 = vmatprep.subr.mxu0 0.0
  %11619 = vmatpush1.msra.mxu0 0.0
  %11620 = vmatprep.subr.mxu0 0.0
  %11621 = vmatpush1.msra.mxu0 0.0
  %11622 = vmatprep.subr.mxu0 0.0
  %11623 = vmatpush1.msra.mxu0 0.0
  %11624 = vmatprep.subr.mxu0 0.0
  %11625 = vmatpush1.msra.mxu0 0.0
  %11626 = vmatprep.subr.mxu0 0.0
  %11627 = vmatpush1.msra.mxu0 0.0
  %11628 = vmatprep.subr.mxu0 0.0
  %11629 = vmatpush1.msra.mxu0 0.0
  %11630 = vmatprep.subr.mxu0 0.0
  %11631 = vmatpush1.msra.mxu0 %v11598
  %11632 = vmatprep.subr.mxu0 0.0
  %11633 = vmatpush1.msra.mxu0 %v11597
  %11634 = vmatprep.subr.mxu0 0.0
  %11635 = vmatpush2.msra.mxu0 0.0
  %11636 = vmatprep.subr.mxu0 0.0
  %11637 = vmatpush2.msra.mxu0 0.0
  %11638 = vmatprep.subr.mxu0 0.0
  %11639 = vmatpush2.msra.mxu0 0.0
  %11640 = vmatprep.subr.mxu0 0.0
  %11641 = vmatpush2.msra.mxu0 0.0
  %11642 = vmatprep.subr.mxu0 0.0
  %11643 = vmatpush2.msra.mxu0 0.0
  %11644 = vmatprep.subr.mxu0 0.0
  %11645 = vmatpush2.msra.mxu0 0.0
  %11646 = vmatprep.subr.mxu0 0.0
  %11647 = vmatpush2.msra.mxu0 0.0
  %11648 = vmatprep.subr.mxu0 0.0
  %11649 = vmatpush2.msra.mxu0 0.0
  %11650 = vmatprep.subr.mxu0 0.0
  %11651 = vmatpush2.msra.mxu0 0.0
  %11652 = vmatprep.subr.mxu0 0.0
  %11653 = vmatpush2.msra.mxu0 0.0
  %11654 = vmatprep.subr.mxu0 0.0
  %11655 = vmatpush2.msra.mxu0 0.0
  %11656 = vmatprep.subr.mxu0 0.0
  %11657 = vmatpush2.msra.mxu0 0.0
  %11658 = vmatprep.subr.mxu0 0.0
  %11659 = vmatpush2.msra.mxu0 0.0
  %11660 = vmatprep.subr.mxu0 0.0
  %11661 = vmatpush2.msra.mxu0 0.0
  %11662 = vmatprep.subr.mxu0 0.0
  %11663 = vmatpush2.msra.mxu0 0.0
  %11664 = vmatprep.subr.mxu0 0.0
  %11665 = vmatpush2.msra.mxu0 0.0
  %11666 = vmatprep.mubr.f32.mxu0 0.0
  %11667 = vmatmul.mubr.f32.gmra.mxu0 %v11600
  %v11668 = vpop.f32.mrf.mxu0
  %v11669 = vadd.f32 0.0, %v11668
  %v11670 = vpop.f32.mrf.mxu0
  %11671 = vdwg.mxu0
  %v11672 = vadd.f32 %v11595, %v11669
  %s11673 = scalar_lea.vmem %s6, 272
  %v11674 = vld [vmem:[%s11673] sm:$0xff]
  %v11675 = vld [vmem:[%s11673 + $0x8] sm:$0xff]
  %v11677 = vsel %vm10371, %v10347, 0
  %11679 = vmatprep.subr.mxu0 0.0
  %11680 = vmatpush1.msra.mxu0 0.0
  %11681 = vmatprep.subr.mxu0 0.0
  %11682 = vmatpush1.msra.mxu0 0.0
  %11683 = vmatprep.subr.mxu0 0.0
  %11684 = vmatpush1.msra.mxu0 0.0
  %11685 = vmatprep.subr.mxu0 0.0
  %11686 = vmatpush1.msra.mxu0 0.0
  %11687 = vmatprep.subr.mxu0 0.0
  %11688 = vmatpush1.msra.mxu0 0.0
  %11689 = vmatprep.subr.mxu0 0.0
  %11690 = vmatpush1.msra.mxu0 0.0
  %11691 = vmatprep.subr.mxu0 0.0
  %11692 = vmatpush1.msra.mxu0 0.0
  %11693 = vmatprep.subr.mxu0 0.0
  %11694 = vmatpush1.msra.mxu0 0.0
  %11695 = vmatprep.subr.mxu0 0.0
  %11696 = vmatpush1.msra.mxu0 0.0
  %11697 = vmatprep.subr.mxu0 0.0
  %11698 = vmatpush1.msra.mxu0 0.0
  %11699 = vmatprep.subr.mxu0 0.0
  %11700 = vmatpush1.msra.mxu0 0.0
  %11701 = vmatprep.subr.mxu0 0.0
  %11702 = vmatpush1.msra.mxu0 0.0
  %11703 = vmatprep.subr.mxu0 0.0
  %11704 = vmatpush1.msra.mxu0 0.0
  %11705 = vmatprep.subr.mxu0 0.0
  %11706 = vmatpush1.msra.mxu0 0.0
  %11707 = vmatprep.subr.mxu0 0.0
  %11708 = vmatpush1.msra.mxu0 %v11675
  %11709 = vmatprep.subr.mxu0 0.0
  %11710 = vmatpush1.msra.mxu0 %v11674
  %11711 = vmatprep.subr.mxu0 0.0
  %11712 = vmatpush2.msra.mxu0 0.0
  %11713 = vmatprep.subr.mxu0 0.0
  %11714 = vmatpush2.msra.mxu0 0.0
  %11715 = vmatprep.subr.mxu0 0.0
  %11716 = vmatpush2.msra.mxu0 0.0
  %11717 = vmatprep.subr.mxu0 0.0
  %11718 = vmatpush2.msra.mxu0 0.0
  %11719 = vmatprep.subr.mxu0 0.0
  %11720 = vmatpush2.msra.mxu0 0.0
  %11721 = vmatprep.subr.mxu0 0.0
  %11722 = vmatpush2.msra.mxu0 0.0
  %11723 = vmatprep.subr.mxu0 0.0
  %11724 = vmatpush2.msra.mxu0 0.0
  %11725 = vmatprep.subr.mxu0 0.0
  %11726 = vmatpush2.msra.mxu0 0.0
  %11727 = vmatprep.subr.mxu0 0.0
  %11728 = vmatpush2.msra.mxu0 0.0
  %11729 = vmatprep.subr.mxu0 0.0
  %11730 = vmatpush2.msra.mxu0 0.0
  %11731 = vmatprep.subr.mxu0 0.0
  %11732 = vmatpush2.msra.mxu0 0.0
  %11733 = vmatprep.subr.mxu0 0.0
  %11734 = vmatpush2.msra.mxu0 0.0
  %11735 = vmatprep.subr.mxu0 0.0
  %11736 = vmatpush2.msra.mxu0 0.0
  %11737 = vmatprep.subr.mxu0 0.0
  %11738 = vmatpush2.msra.mxu0 0.0
  %11739 = vmatprep.subr.mxu0 0.0
  %11740 = vmatpush2.msra.mxu0 0.0
  %11741 = vmatprep.subr.mxu0 0.0
  %11742 = vmatpush2.msra.mxu0 0.0
  %11743 = vmatprep.mubr.f32.mxu0 0.0
  %11744 = vmatmul.mubr.f32.gmra.mxu0 %v11677
  %v11745 = vpop.f32.mrf.mxu0
  %v11746 = vadd.f32 0.0, %v11745
  %v11747 = vpop.f32.mrf.mxu0
  %11748 = vdwg.mxu0
  %v11749 = vadd.f32 %v11672, %v11746
  %s11750 = scalar_lea.vmem %s6, 288
  %v11751 = vld [vmem:[%s11750] sm:$0xff]
  %v11752 = vld [vmem:[%s11750 + $0x8] sm:$0xff]
  %v11754 = vsel %vm10371, %v10348, 0
  %11756 = vmatprep.subr.mxu0 0.0
  %11757 = vmatpush1.msra.mxu0 0.0
  %11758 = vmatprep.subr.mxu0 0.0
  %11759 = vmatpush1.msra.mxu0 0.0
  %11760 = vmatprep.subr.mxu0 0.0
  %11761 = vmatpush1.msra.mxu0 0.0
  %11762 = vmatprep.subr.mxu0 0.0
  %11763 = vmatpush1.msra.mxu0 0.0
  %11764 = vmatprep.subr.mxu0 0.0
  %11765 = vmatpush1.msra.mxu0 0.0
  %11766 = vmatprep.subr.mxu0 0.0
  %11767 = vmatpush1.msra.mxu0 0.0
  %11768 = vmatprep.subr.mxu0 0.0
  %11769 = vmatpush1.msra.mxu0 0.0
  %11770 = vmatprep.subr.mxu0 0.0
  %11771 = vmatpush1.msra.mxu0 0.0
  %11772 = vmatprep.subr.mxu0 0.0
  %11773 = vmatpush1.msra.mxu0 0.0
  %11774 = vmatprep.subr.mxu0 0.0
  %11775 = vmatpush1.msra.mxu0 0.0
  %11776 = vmatprep.subr.mxu0 0.0
  %11777 = vmatpush1.msra.mxu0 0.0
  %11778 = vmatprep.subr.mxu0 0.0
  %11779 = vmatpush1.msra.mxu0 0.0
  %11780 = vmatprep.subr.mxu0 0.0
  %11781 = vmatpush1.msra.mxu0 0.0
  %11782 = vmatprep.subr.mxu0 0.0
  %11783 = vmatpush1.msra.mxu0 0.0
  %11784 = vmatprep.subr.mxu0 0.0
  %11785 = vmatpush1.msra.mxu0 %v11752
  %11786 = vmatprep.subr.mxu0 0.0
  %11787 = vmatpush1.msra.mxu0 %v11751
  %11788 = vmatprep.subr.mxu0 0.0
  %11789 = vmatpush2.msra.mxu0 0.0
  %11790 = vmatprep.subr.mxu0 0.0
  %11791 = vmatpush2.msra.mxu0 0.0
  %11792 = vmatprep.subr.mxu0 0.0
  %11793 = vmatpush2.msra.mxu0 0.0
  %11794 = vmatprep.subr.mxu0 0.0
  %11795 = vmatpush2.msra.mxu0 0.0
  %11796 = vmatprep.subr.mxu0 0.0
  %11797 = vmatpush2.msra.mxu0 0.0
  %11798 = vmatprep.subr.mxu0 0.0
  %11799 = vmatpush2.msra.mxu0 0.0
  %11800 = vmatprep.subr.mxu0 0.0
  %11801 = vmatpush2.msra.mxu0 0.0
  %11802 = vmatprep.subr.mxu0 0.0
  %11803 = vmatpush2.msra.mxu0 0.0
  %11804 = vmatprep.subr.mxu0 0.0
  %11805 = vmatpush2.msra.mxu0 0.0
  %11806 = vmatprep.subr.mxu0 0.0
  %11807 = vmatpush2.msra.mxu0 0.0
  %11808 = vmatprep.subr.mxu0 0.0
  %11809 = vmatpush2.msra.mxu0 0.0
  %11810 = vmatprep.subr.mxu0 0.0
  %11811 = vmatpush2.msra.mxu0 0.0
  %11812 = vmatprep.subr.mxu0 0.0
  %11813 = vmatpush2.msra.mxu0 0.0
  %11814 = vmatprep.subr.mxu0 0.0
  %11815 = vmatpush2.msra.mxu0 0.0
  %11816 = vmatprep.subr.mxu0 0.0
  %11817 = vmatpush2.msra.mxu0 0.0
  %11818 = vmatprep.subr.mxu0 0.0
  %11819 = vmatpush2.msra.mxu0 0.0
  %11820 = vmatprep.mubr.f32.mxu0 0.0
  %11821 = vmatmul.mubr.f32.gmra.mxu0 %v11754
  %v11822 = vpop.f32.mrf.mxu0
  %v11823 = vadd.f32 0.0, %v11822
  %v11824 = vpop.f32.mrf.mxu0
  %11825 = vdwg.mxu0
  %v11826 = vadd.f32 %v11749, %v11823
  %s11827 = scalar_lea.vmem %s6, 304
  %v11828 = vld [vmem:[%s11827] sm:$0xff]
  %v11829 = vld [vmem:[%s11827 + $0x8] sm:$0xff]
  %v11831 = vsel %vm10371, %v10349, 0
  %11833 = vmatprep.subr.mxu0 0.0
  %11834 = vmatpush1.msra.mxu0 0.0
  %11835 = vmatprep.subr.mxu0 0.0
  %11836 = vmatpush1.msra.mxu0 0.0
  %11837 = vmatprep.subr.mxu0 0.0
  %11838 = vmatpush1.msra.mxu0 0.0
  %11839 = vmatprep.subr.mxu0 0.0
  %11840 = vmatpush1.msra.mxu0 0.0
  %11841 = vmatprep.subr.mxu0 0.0
  %11842 = vmatpush1.msra.mxu0 0.0
  %11843 = vmatprep.subr.mxu0 0.0
  %11844 = vmatpush1.msra.mxu0 0.0
  %11845 = vmatprep.subr.mxu0 0.0
  %11846 = vmatpush1.msra.mxu0 0.0
  %11847 = vmatprep.subr.mxu0 0.0
  %11848 = vmatpush1.msra.mxu0 0.0
  %11849 = vmatprep.subr.mxu0 0.0
  %11850 = vmatpush1.msra.mxu0 0.0
  %11851 = vmatprep.subr.mxu0 0.0
  %11852 = vmatpush1.msra.mxu0 0.0
  %11853 = vmatprep.subr.mxu0 0.0
  %11854 = vmatpush1.msra.mxu0 0.0
  %11855 = vmatprep.subr.mxu0 0.0
  %11856 = vmatpush1.msra.mxu0 0.0
  %11857 = vmatprep.subr.mxu0 0.0
  %11858 = vmatpush1.msra.mxu0 0.0
  %11859 = vmatprep.subr.mxu0 0.0
  %11860 = vmatpush1.msra.mxu0 0.0
  %11861 = vmatprep.subr.mxu0 0.0
  %11862 = vmatpush1.msra.mxu0 %v11829
  %11863 = vmatprep.subr.mxu0 0.0
  %11864 = vmatpush1.msra.mxu0 %v11828
  %11865 = vmatprep.subr.mxu0 0.0
  %11866 = vmatpush2.msra.mxu0 0.0
  %11867 = vmatprep.subr.mxu0 0.0
  %11868 = vmatpush2.msra.mxu0 0.0
  %11869 = vmatprep.subr.mxu0 0.0
  %11870 = vmatpush2.msra.mxu0 0.0
  %11871 = vmatprep.subr.mxu0 0.0
  %11872 = vmatpush2.msra.mxu0 0.0
  %11873 = vmatprep.subr.mxu0 0.0
  %11874 = vmatpush2.msra.mxu0 0.0
  %11875 = vmatprep.subr.mxu0 0.0
  %11876 = vmatpush2.msra.mxu0 0.0
  %11877 = vmatprep.subr.mxu0 0.0
  %11878 = vmatpush2.msra.mxu0 0.0
  %11879 = vmatprep.subr.mxu0 0.0
  %11880 = vmatpush2.msra.mxu0 0.0
  %11881 = vmatprep.subr.mxu0 0.0
  %11882 = vmatpush2.msra.mxu0 0.0
  %11883 = vmatprep.subr.mxu0 0.0
  %11884 = vmatpush2.msra.mxu0 0.0
  %11885 = vmatprep.subr.mxu0 0.0
  %11886 = vmatpush2.msra.mxu0 0.0
  %11887 = vmatprep.subr.mxu0 0.0
  %11888 = vmatpush2.msra.mxu0 0.0
  %11889 = vmatprep.subr.mxu0 0.0
  %11890 = vmatpush2.msra.mxu0 0.0
  %11891 = vmatprep.subr.mxu0 0.0
  %11892 = vmatpush2.msra.mxu0 0.0
  %11893 = vmatprep.subr.mxu0 0.0
  %11894 = vmatpush2.msra.mxu0 0.0
  %11895 = vmatprep.subr.mxu0 0.0
  %11896 = vmatpush2.msra.mxu0 0.0
  %11897 = vmatprep.mubr.f32.mxu0 0.0
  %11898 = vmatmul.mubr.f32.gmra.mxu0 %v11831
  %v11899 = vpop.f32.mrf.mxu0
  %v11900 = vadd.f32 0.0, %v11899
  %v11901 = vpop.f32.mrf.mxu0
  %11902 = vdwg.mxu0
  %v11903 = vadd.f32 %v11826, %v11900
  %s11904 = scalar_lea.vmem %s6, 320
  %v11905 = vld [vmem:[%s11904] sm:$0xff]
  %v11906 = vld [vmem:[%s11904 + $0x8] sm:$0xff]
  %v11908 = vsel %vm10371, %v10350, 0
  %11910 = vmatprep.subr.mxu0 0.0
  %11911 = vmatpush1.msra.mxu0 0.0
  %11912 = vmatprep.subr.mxu0 0.0
  %11913 = vmatpush1.msra.mxu0 0.0
  %11914 = vmatprep.subr.mxu0 0.0
  %11915 = vmatpush1.msra.mxu0 0.0
  %11916 = vmatprep.subr.mxu0 0.0
  %11917 = vmatpush1.msra.mxu0 0.0
  %11918 = vmatprep.subr.mxu0 0.0
  %11919 = vmatpush1.msra.mxu0 0.0
  %11920 = vmatprep.subr.mxu0 0.0
  %11921 = vmatpush1.msra.mxu0 0.0
  %11922 = vmatprep.subr.mxu0 0.0
  %11923 = vmatpush1.msra.mxu0 0.0
  %11924 = vmatprep.subr.mxu0 0.0
  %11925 = vmatpush1.msra.mxu0 0.0
  %11926 = vmatprep.subr.mxu0 0.0
  %11927 = vmatpush1.msra.mxu0 0.0
  %11928 = vmatprep.subr.mxu0 0.0
  %11929 = vmatpush1.msra.mxu0 0.0
  %11930 = vmatprep.subr.mxu0 0.0
  %11931 = vmatpush1.msra.mxu0 0.0
  %11932 = vmatprep.subr.mxu0 0.0
  %11933 = vmatpush1.msra.mxu0 0.0
  %11934 = vmatprep.subr.mxu0 0.0
  %11935 = vmatpush1.msra.mxu0 0.0
  %11936 = vmatprep.subr.mxu0 0.0
  %11937 = vmatpush1.msra.mxu0 0.0
  %11938 = vmatprep.subr.mxu0 0.0
  %11939 = vmatpush1.msra.mxu0 %v11906
  %11940 = vmatprep.subr.mxu0 0.0
  %11941 = vmatpush1.msra.mxu0 %v11905
  %11942 = vmatprep.subr.mxu0 0.0
  %11943 = vmatpush2.msra.mxu0 0.0
  %11944 = vmatprep.subr.mxu0 0.0
  %11945 = vmatpush2.msra.mxu0 0.0
  %11946 = vmatprep.subr.mxu0 0.0
  %11947 = vmatpush2.msra.mxu0 0.0
  %11948 = vmatprep.subr.mxu0 0.0
  %11949 = vmatpush2.msra.mxu0 0.0
  %11950 = vmatprep.subr.mxu0 0.0
  %11951 = vmatpush2.msra.mxu0 0.0
  %11952 = vmatprep.subr.mxu0 0.0
  %11953 = vmatpush2.msra.mxu0 0.0
  %11954 = vmatprep.subr.mxu0 0.0
  %11955 = vmatpush2.msra.mxu0 0.0
  %11956 = vmatprep.subr.mxu0 0.0
  %11957 = vmatpush2.msra.mxu0 0.0
  %11958 = vmatprep.subr.mxu0 0.0
  %11959 = vmatpush2.msra.mxu0 0.0
  %11960 = vmatprep.subr.mxu0 0.0
  %11961 = vmatpush2.msra.mxu0 0.0
  %11962 = vmatprep.subr.mxu0 0.0
  %11963 = vmatpush2.msra.mxu0 0.0
  %11964 = vmatprep.subr.mxu0 0.0
  %11965 = vmatpush2.msra.mxu0 0.0
  %11966 = vmatprep.subr.mxu0 0.0
  %11967 = vmatpush2.msra.mxu0 0.0
  %11968 = vmatprep.subr.mxu0 0.0
  %11969 = vmatpush2.msra.mxu0 0.0
  %11970 = vmatprep.subr.mxu0 0.0
  %11971 = vmatpush2.msra.mxu0 0.0
  %11972 = vmatprep.subr.mxu0 0.0
  %11973 = vmatpush2.msra.mxu0 0.0
  %11974 = vmatprep.mubr.f32.mxu0 0.0
  %11975 = vmatmul.mubr.f32.gmra.mxu0 %v11908
  %v11976 = vpop.f32.mrf.mxu0
  %v11977 = vadd.f32 0.0, %v11976
  %v11978 = vpop.f32.mrf.mxu0
  %11979 = vdwg.mxu0
  %v11980 = vadd.f32 %v11903, %v11977
  %s11981 = scalar_lea.vmem %s6, 336
  %v11982 = vld [vmem:[%s11981] sm:$0xff]
  %v11983 = vld [vmem:[%s11981 + $0x8] sm:$0xff]
  %v11985 = vsel %vm10371, %v10351, 0
  %11987 = vmatprep.subr.mxu0 0.0
  %11988 = vmatpush1.msra.mxu0 0.0
  %11989 = vmatprep.subr.mxu0 0.0
  %11990 = vmatpush1.msra.mxu0 0.0
  %11991 = vmatprep.subr.mxu0 0.0
  %11992 = vmatpush1.msra.mxu0 0.0
  %11993 = vmatprep.subr.mxu0 0.0
  %11994 = vmatpush1.msra.mxu0 0.0
  %11995 = vmatprep.subr.mxu0 0.0
  %11996 = vmatpush1.msra.mxu0 0.0
  %11997 = vmatprep.subr.mxu0 0.0
  %11998 = vmatpush1.msra.mxu0 0.0
  %11999 = vmatprep.subr.mxu0 0.0
  %12000 = vmatpush1.msra.mxu0 0.0
  %12001 = vmatprep.subr.mxu0 0.0
  %12002 = vmatpush1.msra.mxu0 0.0
  %12003 = vmatprep.subr.mxu0 0.0
  %12004 = vmatpush1.msra.mxu0 0.0
  %12005 = vmatprep.subr.mxu0 0.0
  %12006 = vmatpush1.msra.mxu0 0.0
  %12007 = vmatprep.subr.mxu0 0.0
  %12008 = vmatpush1.msra.mxu0 0.0
  %12009 = vmatprep.subr.mxu0 0.0
  %12010 = vmatpush1.msra.mxu0 0.0
  %12011 = vmatprep.subr.mxu0 0.0
  %12012 = vmatpush1.msra.mxu0 0.0
  %12013 = vmatprep.subr.mxu0 0.0
  %12014 = vmatpush1.msra.mxu0 0.0
  %12015 = vmatprep.subr.mxu0 0.0
  %12016 = vmatpush1.msra.mxu0 %v11983
  %12017 = vmatprep.subr.mxu0 0.0
  %12018 = vmatpush1.msra.mxu0 %v11982
  %12019 = vmatprep.subr.mxu0 0.0
  %12020 = vmatpush2.msra.mxu0 0.0
  %12021 = vmatprep.subr.mxu0 0.0
  %12022 = vmatpush2.msra.mxu0 0.0
  %12023 = vmatprep.subr.mxu0 0.0
  %12024 = vmatpush2.msra.mxu0 0.0
  %12025 = vmatprep.subr.mxu0 0.0
  %12026 = vmatpush2.msra.mxu0 0.0
  %12027 = vmatprep.subr.mxu0 0.0
  %12028 = vmatpush2.msra.mxu0 0.0
  %12029 = vmatprep.subr.mxu0 0.0
  %12030 = vmatpush2.msra.mxu0 0.0
  %12031 = vmatprep.subr.mxu0 0.0
  %12032 = vmatpush2.msra.mxu0 0.0
  %12033 = vmatprep.subr.mxu0 0.0
  %12034 = vmatpush2.msra.mxu0 0.0
  %12035 = vmatprep.subr.mxu0 0.0
  %12036 = vmatpush2.msra.mxu0 0.0
  %12037 = vmatprep.subr.mxu0 0.0
  %12038 = vmatpush2.msra.mxu0 0.0
  %12039 = vmatprep.subr.mxu0 0.0
  %12040 = vmatpush2.msra.mxu0 0.0
  %12041 = vmatprep.subr.mxu0 0.0
  %12042 = vmatpush2.msra.mxu0 0.0
  %12043 = vmatprep.subr.mxu0 0.0
  %12044 = vmatpush2.msra.mxu0 0.0
  %12045 = vmatprep.subr.mxu0 0.0
  %12046 = vmatpush2.msra.mxu0 0.0
  %12047 = vmatprep.subr.mxu0 0.0
  %12048 = vmatpush2.msra.mxu0 0.0
  %12049 = vmatprep.subr.mxu0 0.0
  %12050 = vmatpush2.msra.mxu0 0.0
  %12051 = vmatprep.mubr.f32.mxu0 0.0
  %12052 = vmatmul.mubr.f32.gmra.mxu0 %v11985
  %v12053 = vpop.f32.mrf.mxu0
  %v12054 = vadd.f32 0.0, %v12053
  %v12055 = vpop.f32.mrf.mxu0
  %12056 = vdwg.mxu0
  %v12057 = vadd.f32 %v11980, %v12054
  %s12058 = scalar_lea.vmem %s6, 352
  %v12059 = vld [vmem:[%s12058] sm:$0xff]
  %v12060 = vld [vmem:[%s12058 + $0x8] sm:$0xff]
  %v12062 = vsel %vm10371, %v10352, 0
  %12064 = vmatprep.subr.mxu0 0.0
  %12065 = vmatpush1.msra.mxu0 0.0
  %12066 = vmatprep.subr.mxu0 0.0
  %12067 = vmatpush1.msra.mxu0 0.0
  %12068 = vmatprep.subr.mxu0 0.0
  %12069 = vmatpush1.msra.mxu0 0.0
  %12070 = vmatprep.subr.mxu0 0.0
  %12071 = vmatpush1.msra.mxu0 0.0
  %12072 = vmatprep.subr.mxu0 0.0
  %12073 = vmatpush1.msra.mxu0 0.0
  %12074 = vmatprep.subr.mxu0 0.0
  %12075 = vmatpush1.msra.mxu0 0.0
  %12076 = vmatprep.subr.mxu0 0.0
  %12077 = vmatpush1.msra.mxu0 0.0
  %12078 = vmatprep.subr.mxu0 0.0
  %12079 = vmatpush1.msra.mxu0 0.0
  %12080 = vmatprep.subr.mxu0 0.0
  %12081 = vmatpush1.msra.mxu0 0.0
  %12082 = vmatprep.subr.mxu0 0.0
  %12083 = vmatpush1.msra.mxu0 0.0
  %12084 = vmatprep.subr.mxu0 0.0
  %12085 = vmatpush1.msra.mxu0 0.0
  %12086 = vmatprep.subr.mxu0 0.0
  %12087 = vmatpush1.msra.mxu0 0.0
  %12088 = vmatprep.subr.mxu0 0.0
  %12089 = vmatpush1.msra.mxu0 0.0
  %12090 = vmatprep.subr.mxu0 0.0
  %12091 = vmatpush1.msra.mxu0 0.0
  %12092 = vmatprep.subr.mxu0 0.0
  %12093 = vmatpush1.msra.mxu0 %v12060
  %12094 = vmatprep.subr.mxu0 0.0
  %12095 = vmatpush1.msra.mxu0 %v12059
  %12096 = vmatprep.subr.mxu0 0.0
  %12097 = vmatpush2.msra.mxu0 0.0
  %12098 = vmatprep.subr.mxu0 0.0
  %12099 = vmatpush2.msra.mxu0 0.0
  %12100 = vmatprep.subr.mxu0 0.0
  %12101 = vmatpush2.msra.mxu0 0.0
  %12102 = vmatprep.subr.mxu0 0.0
  %12103 = vmatpush2.msra.mxu0 0.0
  %12104 = vmatprep.subr.mxu0 0.0
  %12105 = vmatpush2.msra.mxu0 0.0
  %12106 = vmatprep.subr.mxu0 0.0
  %12107 = vmatpush2.msra.mxu0 0.0
  %12108 = vmatprep.subr.mxu0 0.0
  %12109 = vmatpush2.msra.mxu0 0.0
  %12110 = vmatprep.subr.mxu0 0.0
  %12111 = vmatpush2.msra.mxu0 0.0
  %12112 = vmatprep.subr.mxu0 0.0
  %12113 = vmatpush2.msra.mxu0 0.0
  %12114 = vmatprep.subr.mxu0 0.0
  %12115 = vmatpush2.msra.mxu0 0.0
  %12116 = vmatprep.subr.mxu0 0.0
  %12117 = vmatpush2.msra.mxu0 0.0
  %12118 = vmatprep.subr.mxu0 0.0
  %12119 = vmatpush2.msra.mxu0 0.0
  %12120 = vmatprep.subr.mxu0 0.0
  %12121 = vmatpush2.msra.mxu0 0.0
  %12122 = vmatprep.subr.mxu0 0.0
  %12123 = vmatpush2.msra.mxu0 0.0
  %12124 = vmatprep.subr.mxu0 0.0
  %12125 = vmatpush2.msra.mxu0 0.0
  %12126 = vmatprep.subr.mxu0 0.0
  %12127 = vmatpush2.msra.mxu0 0.0
  %12128 = vmatprep.mubr.f32.mxu0 0.0
  %12129 = vmatmul.mubr.f32.gmra.mxu0 %v12062
  %v12130 = vpop.f32.mrf.mxu0
  %v12131 = vadd.f32 0.0, %v12130
  %v12132 = vpop.f32.mrf.mxu0
  %12133 = vdwg.mxu0
  %v12134 = vadd.f32 %v12057, %v12131
  %s12135 = scalar_lea.vmem %s6, 368
  %v12136 = vld [vmem:[%s12135] sm:$0xff]
  %v12137 = vld [vmem:[%s12135 + $0x8] sm:$0xff]
  %v12139 = vsel %vm10371, %v10353, 0
  %12141 = vmatprep.subr.mxu0 0.0
  %12142 = vmatpush1.msra.mxu0 0.0
  %12143 = vmatprep.subr.mxu0 0.0
  %12144 = vmatpush1.msra.mxu0 0.0
  %12145 = vmatprep.subr.mxu0 0.0
  %12146 = vmatpush1.msra.mxu0 0.0
  %12147 = vmatprep.subr.mxu0 0.0
  %12148 = vmatpush1.msra.mxu0 0.0
  %12149 = vmatprep.subr.mxu0 0.0
  %12150 = vmatpush1.msra.mxu0 0.0
  %12151 = vmatprep.subr.mxu0 0.0
  %12152 = vmatpush1.msra.mxu0 0.0
  %12153 = vmatprep.subr.mxu0 0.0
  %12154 = vmatpush1.msra.mxu0 0.0
  %12155 = vmatprep.subr.mxu0 0.0
  %12156 = vmatpush1.msra.mxu0 0.0
  %12157 = vmatprep.subr.mxu0 0.0
  %12158 = vmatpush1.msra.mxu0 0.0
  %12159 = vmatprep.subr.mxu0 0.0
  %12160 = vmatpush1.msra.mxu0 0.0
  %12161 = vmatprep.subr.mxu0 0.0
  %12162 = vmatpush1.msra.mxu0 0.0
  %12163 = vmatprep.subr.mxu0 0.0
  %12164 = vmatpush1.msra.mxu0 0.0
  %12165 = vmatprep.subr.mxu0 0.0
  %12166 = vmatpush1.msra.mxu0 0.0
  %12167 = vmatprep.subr.mxu0 0.0
  %12168 = vmatpush1.msra.mxu0 0.0
  %12169 = vmatprep.subr.mxu0 0.0
  %12170 = vmatpush1.msra.mxu0 %v12137
  %12171 = vmatprep.subr.mxu0 0.0
  %12172 = vmatpush1.msra.mxu0 %v12136
  %12173 = vmatprep.subr.mxu0 0.0
  %12174 = vmatpush2.msra.mxu0 0.0
  %12175 = vmatprep.subr.mxu0 0.0
  %12176 = vmatpush2.msra.mxu0 0.0
  %12177 = vmatprep.subr.mxu0 0.0
  %12178 = vmatpush2.msra.mxu0 0.0
  %12179 = vmatprep.subr.mxu0 0.0
  %12180 = vmatpush2.msra.mxu0 0.0
  %12181 = vmatprep.subr.mxu0 0.0
  %12182 = vmatpush2.msra.mxu0 0.0
  %12183 = vmatprep.subr.mxu0 0.0
  %12184 = vmatpush2.msra.mxu0 0.0
  %12185 = vmatprep.subr.mxu0 0.0
  %12186 = vmatpush2.msra.mxu0 0.0
  %12187 = vmatprep.subr.mxu0 0.0
  %12188 = vmatpush2.msra.mxu0 0.0
  %12189 = vmatprep.subr.mxu0 0.0
  %12190 = vmatpush2.msra.mxu0 0.0
  %12191 = vmatprep.subr.mxu0 0.0
  %12192 = vmatpush2.msra.mxu0 0.0
  %12193 = vmatprep.subr.mxu0 0.0
  %12194 = vmatpush2.msra.mxu0 0.0
  %12195 = vmatprep.subr.mxu0 0.0
  %12196 = vmatpush2.msra.mxu0 0.0
  %12197 = vmatprep.subr.mxu0 0.0
  %12198 = vmatpush2.msra.mxu0 0.0
  %12199 = vmatprep.subr.mxu0 0.0
  %12200 = vmatpush2.msra.mxu0 0.0
  %12201 = vmatprep.subr.mxu0 0.0
  %12202 = vmatpush2.msra.mxu0 0.0
  %12203 = vmatprep.subr.mxu0 0.0
  %12204 = vmatpush2.msra.mxu0 0.0
  %12205 = vmatprep.mubr.f32.mxu0 0.0
  %12206 = vmatmul.mubr.f32.gmra.mxu0 %v12139
  %v12207 = vpop.f32.mrf.mxu0
  %v12208 = vadd.f32 0.0, %v12207
  %v12209 = vpop.f32.mrf.mxu0
  %12210 = vdwg.mxu0
  %v12211 = vadd.f32 %v12134, %v12208
  %s12212 = scalar_lea.vmem %s6, 384
  %v12213 = vld [vmem:[%s12212] sm:$0xff]
  %v12214 = vld [vmem:[%s12212 + $0x8] sm:$0xff]
  %v12216 = vsel %vm10371, %v10354, 0
  %12218 = vmatprep.subr.mxu0 0.0
  %12219 = vmatpush1.msra.mxu0 0.0
  %12220 = vmatprep.subr.mxu0 0.0
  %12221 = vmatpush1.msra.mxu0 0.0
  %12222 = vmatprep.subr.mxu0 0.0
  %12223 = vmatpush1.msra.mxu0 0.0
  %12224 = vmatprep.subr.mxu0 0.0
  %12225 = vmatpush1.msra.mxu0 0.0
  %12226 = vmatprep.subr.mxu0 0.0
  %12227 = vmatpush1.msra.mxu0 0.0
  %12228 = vmatprep.subr.mxu0 0.0
  %12229 = vmatpush1.msra.mxu0 0.0
  %12230 = vmatprep.subr.mxu0 0.0
  %12231 = vmatpush1.msra.mxu0 0.0
  %12232 = vmatprep.subr.mxu0 0.0
  %12233 = vmatpush1.msra.mxu0 0.0
  %12234 = vmatprep.subr.mxu0 0.0
  %12235 = vmatpush1.msra.mxu0 0.0
  %12236 = vmatprep.subr.mxu0 0.0
  %12237 = vmatpush1.msra.mxu0 0.0
  %12238 = vmatprep.subr.mxu0 0.0
  %12239 = vmatpush1.msra.mxu0 0.0
  %12240 = vmatprep.subr.mxu0 0.0
  %12241 = vmatpush1.msra.mxu0 0.0
  %12242 = vmatprep.subr.mxu0 0.0
  %12243 = vmatpush1.msra.mxu0 0.0
  %12244 = vmatprep.subr.mxu0 0.0
  %12245 = vmatpush1.msra.mxu0 0.0
  %12246 = vmatprep.subr.mxu0 0.0
  %12247 = vmatpush1.msra.mxu0 %v12214
  %12248 = vmatprep.subr.mxu0 0.0
  %12249 = vmatpush1.msra.mxu0 %v12213
  %12250 = vmatprep.subr.mxu0 0.0
  %12251 = vmatpush2.msra.mxu0 0.0
  %12252 = vmatprep.subr.mxu0 0.0
  %12253 = vmatpush2.msra.mxu0 0.0
  %12254 = vmatprep.subr.mxu0 0.0
  %12255 = vmatpush2.msra.mxu0 0.0
  %12256 = vmatprep.subr.mxu0 0.0
  %12257 = vmatpush2.msra.mxu0 0.0
  %12258 = vmatprep.subr.mxu0 0.0
  %12259 = vmatpush2.msra.mxu0 0.0
  %12260 = vmatprep.subr.mxu0 0.0
  %12261 = vmatpush2.msra.mxu0 0.0
  %12262 = vmatprep.subr.mxu0 0.0
  %12263 = vmatpush2.msra.mxu0 0.0
  %12264 = vmatprep.subr.mxu0 0.0
  %12265 = vmatpush2.msra.mxu0 0.0
  %12266 = vmatprep.subr.mxu0 0.0
  %12267 = vmatpush2.msra.mxu0 0.0
  %12268 = vmatprep.subr.mxu0 0.0
  %12269 = vmatpush2.msra.mxu0 0.0
  %12270 = vmatprep.subr.mxu0 0.0
  %12271 = vmatpush2.msra.mxu0 0.0
  %12272 = vmatprep.subr.mxu0 0.0
  %12273 = vmatpush2.msra.mxu0 0.0
  %12274 = vmatprep.subr.mxu0 0.0
  %12275 = vmatpush2.msra.mxu0 0.0
  %12276 = vmatprep.subr.mxu0 0.0
  %12277 = vmatpush2.msra.mxu0 0.0
  %12278 = vmatprep.subr.mxu0 0.0
  %12279 = vmatpush2.msra.mxu0 0.0
  %12280 = vmatprep.subr.mxu0 0.0
  %12281 = vmatpush2.msra.mxu0 0.0
  %12282 = vmatprep.mubr.f32.mxu0 0.0
  %12283 = vmatmul.mubr.f32.gmra.mxu0 %v12216
  %v12284 = vpop.f32.mrf.mxu0
  %v12285 = vadd.f32 0.0, %v12284
  %v12286 = vpop.f32.mrf.mxu0
  %12287 = vdwg.mxu0
  %v12288 = vadd.f32 %v12211, %v12285
  %s12289 = scalar_lea.vmem %s6, 400
  %v12290 = vld [vmem:[%s12289] sm:$0xff]
  %v12291 = vld [vmem:[%s12289 + $0x8] sm:$0xff]
  %v12293 = vsel %vm10371, %v10355, 0
  %12295 = vmatprep.subr.mxu0 0.0
  %12296 = vmatpush1.msra.mxu0 0.0
  %12297 = vmatprep.subr.mxu0 0.0
  %12298 = vmatpush1.msra.mxu0 0.0
  %12299 = vmatprep.subr.mxu0 0.0
  %12300 = vmatpush1.msra.mxu0 0.0
  %12301 = vmatprep.subr.mxu0 0.0
  %12302 = vmatpush1.msra.mxu0 0.0
  %12303 = vmatprep.subr.mxu0 0.0
  %12304 = vmatpush1.msra.mxu0 0.0
  %12305 = vmatprep.subr.mxu0 0.0
  %12306 = vmatpush1.msra.mxu0 0.0
  %12307 = vmatprep.subr.mxu0 0.0
  %12308 = vmatpush1.msra.mxu0 0.0
  %12309 = vmatprep.subr.mxu0 0.0
  %12310 = vmatpush1.msra.mxu0 0.0
  %12311 = vmatprep.subr.mxu0 0.0
  %12312 = vmatpush1.msra.mxu0 0.0
  %12313 = vmatprep.subr.mxu0 0.0
  %12314 = vmatpush1.msra.mxu0 0.0
  %12315 = vmatprep.subr.mxu0 0.0
  %12316 = vmatpush1.msra.mxu0 0.0
  %12317 = vmatprep.subr.mxu0 0.0
  %12318 = vmatpush1.msra.mxu0 0.0
  %12319 = vmatprep.subr.mxu0 0.0
  %12320 = vmatpush1.msra.mxu0 0.0
  %12321 = vmatprep.subr.mxu0 0.0
  %12322 = vmatpush1.msra.mxu0 0.0
  %12323 = vmatprep.subr.mxu0 0.0
  %12324 = vmatpush1.msra.mxu0 %v12291
  %12325 = vmatprep.subr.mxu0 0.0
  %12326 = vmatpush1.msra.mxu0 %v12290
  %12327 = vmatprep.subr.mxu0 0.0
  %12328 = vmatpush2.msra.mxu0 0.0
  %12329 = vmatprep.subr.mxu0 0.0
  %12330 = vmatpush2.msra.mxu0 0.0
  %12331 = vmatprep.subr.mxu0 0.0
  %12332 = vmatpush2.msra.mxu0 0.0
  %12333 = vmatprep.subr.mxu0 0.0
  %12334 = vmatpush2.msra.mxu0 0.0
  %12335 = vmatprep.subr.mxu0 0.0
  %12336 = vmatpush2.msra.mxu0 0.0
  %12337 = vmatprep.subr.mxu0 0.0
  %12338 = vmatpush2.msra.mxu0 0.0
  %12339 = vmatprep.subr.mxu0 0.0
  %12340 = vmatpush2.msra.mxu0 0.0
  %12341 = vmatprep.subr.mxu0 0.0
  %12342 = vmatpush2.msra.mxu0 0.0
  %12343 = vmatprep.subr.mxu0 0.0
  %12344 = vmatpush2.msra.mxu0 0.0
  %12345 = vmatprep.subr.mxu0 0.0
  %12346 = vmatpush2.msra.mxu0 0.0
  %12347 = vmatprep.subr.mxu0 0.0
  %12348 = vmatpush2.msra.mxu0 0.0
  %12349 = vmatprep.subr.mxu0 0.0
  %12350 = vmatpush2.msra.mxu0 0.0
  %12351 = vmatprep.subr.mxu0 0.0
  %12352 = vmatpush2.msra.mxu0 0.0
  %12353 = vmatprep.subr.mxu0 0.0
  %12354 = vmatpush2.msra.mxu0 0.0
  %12355 = vmatprep.subr.mxu0 0.0
  %12356 = vmatpush2.msra.mxu0 0.0
  %12357 = vmatprep.subr.mxu0 0.0
  %12358 = vmatpush2.msra.mxu0 0.0
  %12359 = vmatprep.mubr.f32.mxu0 0.0
  %12360 = vmatmul.mubr.f32.gmra.mxu0 %v12293
  %v12361 = vpop.f32.mrf.mxu0
  %v12362 = vadd.f32 0.0, %v12361
  %v12363 = vpop.f32.mrf.mxu0
  %12364 = vdwg.mxu0
  %v12365 = vadd.f32 %v12288, %v12362
  %s12366 = scalar_lea.vmem %s6, 416
  %v12367 = vld [vmem:[%s12366] sm:$0xff]
  %v12368 = vld [vmem:[%s12366 + $0x8] sm:$0xff]
  %v12370 = vsel %vm10371, %v10356, 0
  %12372 = vmatprep.subr.mxu0 0.0
  %12373 = vmatpush1.msra.mxu0 0.0
  %12374 = vmatprep.subr.mxu0 0.0
  %12375 = vmatpush1.msra.mxu0 0.0
  %12376 = vmatprep.subr.mxu0 0.0
  %12377 = vmatpush1.msra.mxu0 0.0
  %12378 = vmatprep.subr.mxu0 0.0
  %12379 = vmatpush1.msra.mxu0 0.0
  %12380 = vmatprep.subr.mxu0 0.0
  %12381 = vmatpush1.msra.mxu0 0.0
  %12382 = vmatprep.subr.mxu0 0.0
  %12383 = vmatpush1.msra.mxu0 0.0
  %12384 = vmatprep.subr.mxu0 0.0
  %12385 = vmatpush1.msra.mxu0 0.0
  %12386 = vmatprep.subr.mxu0 0.0
  %12387 = vmatpush1.msra.mxu0 0.0
  %12388 = vmatprep.subr.mxu0 0.0
  %12389 = vmatpush1.msra.mxu0 0.0
  %12390 = vmatprep.subr.mxu0 0.0
  %12391 = vmatpush1.msra.mxu0 0.0
  %12392 = vmatprep.subr.mxu0 0.0
  %12393 = vmatpush1.msra.mxu0 0.0
  %12394 = vmatprep.subr.mxu0 0.0
  %12395 = vmatpush1.msra.mxu0 0.0
  %12396 = vmatprep.subr.mxu0 0.0
  %12397 = vmatpush1.msra.mxu0 0.0
  %12398 = vmatprep.subr.mxu0 0.0
  %12399 = vmatpush1.msra.mxu0 0.0
  %12400 = vmatprep.subr.mxu0 0.0
  %12401 = vmatpush1.msra.mxu0 %v12368
  %12402 = vmatprep.subr.mxu0 0.0
  %12403 = vmatpush1.msra.mxu0 %v12367
  %12404 = vmatprep.subr.mxu0 0.0
  %12405 = vmatpush2.msra.mxu0 0.0
  %12406 = vmatprep.subr.mxu0 0.0
  %12407 = vmatpush2.msra.mxu0 0.0
  %12408 = vmatprep.subr.mxu0 0.0
  %12409 = vmatpush2.msra.mxu0 0.0
  %12410 = vmatprep.subr.mxu0 0.0
  %12411 = vmatpush2.msra.mxu0 0.0
  %12412 = vmatprep.subr.mxu0 0.0
  %12413 = vmatpush2.msra.mxu0 0.0
  %12414 = vmatprep.subr.mxu0 0.0
  %12415 = vmatpush2.msra.mxu0 0.0
  %12416 = vmatprep.subr.mxu0 0.0
  %12417 = vmatpush2.msra.mxu0 0.0
  %12418 = vmatprep.subr.mxu0 0.0
  %12419 = vmatpush2.msra.mxu0 0.0
  %12420 = vmatprep.subr.mxu0 0.0
  %12421 = vmatpush2.msra.mxu0 0.0
  %12422 = vmatprep.subr.mxu0 0.0
  %12423 = vmatpush2.msra.mxu0 0.0
  %12424 = vmatprep.subr.mxu0 0.0
  %12425 = vmatpush2.msra.mxu0 0.0
  %12426 = vmatprep.subr.mxu0 0.0
  %12427 = vmatpush2.msra.mxu0 0.0
  %12428 = vmatprep.subr.mxu0 0.0
  %12429 = vmatpush2.msra.mxu0 0.0
  %12430 = vmatprep.subr.mxu0 0.0
  %12431 = vmatpush2.msra.mxu0 0.0
  %12432 = vmatprep.subr.mxu0 0.0
  %12433 = vmatpush2.msra.mxu0 0.0
  %12434 = vmatprep.subr.mxu0 0.0
  %12435 = vmatpush2.msra.mxu0 0.0
  %12436 = vmatprep.mubr.f32.mxu0 0.0
  %12437 = vmatmul.mubr.f32.gmra.mxu0 %v12370
  %v12438 = vpop.f32.mrf.mxu0
  %v12439 = vadd.f32 0.0, %v12438
  %v12440 = vpop.f32.mrf.mxu0
  %12441 = vdwg.mxu0
  %v12442 = vadd.f32 %v12365, %v12439
  %s12443 = scalar_lea.vmem %s6, 432
  %v12444 = vld [vmem:[%s12443] sm:$0xff]
  %v12445 = vld [vmem:[%s12443 + $0x8] sm:$0xff]
  %v12447 = vsel %vm10371, %v10357, 0
  %12449 = vmatprep.subr.mxu0 0.0
  %12450 = vmatpush1.msra.mxu0 0.0
  %12451 = vmatprep.subr.mxu0 0.0
  %12452 = vmatpush1.msra.mxu0 0.0
  %12453 = vmatprep.subr.mxu0 0.0
  %12454 = vmatpush1.msra.mxu0 0.0
  %12455 = vmatprep.subr.mxu0 0.0
  %12456 = vmatpush1.msra.mxu0 0.0
  %12457 = vmatprep.subr.mxu0 0.0
  %12458 = vmatpush1.msra.mxu0 0.0
  %12459 = vmatprep.subr.mxu0 0.0
  %12460 = vmatpush1.msra.mxu0 0.0
  %12461 = vmatprep.subr.mxu0 0.0
  %12462 = vmatpush1.msra.mxu0 0.0
  %12463 = vmatprep.subr.mxu0 0.0
  %12464 = vmatpush1.msra.mxu0 0.0
  %12465 = vmatprep.subr.mxu0 0.0
  %12466 = vmatpush1.msra.mxu0 0.0
  %12467 = vmatprep.subr.mxu0 0.0
  %12468 = vmatpush1.msra.mxu0 0.0
  %12469 = vmatprep.subr.mxu0 0.0
  %12470 = vmatpush1.msra.mxu0 0.0
  %12471 = vmatprep.subr.mxu0 0.0
  %12472 = vmatpush1.msra.mxu0 0.0
  %12473 = vmatprep.subr.mxu0 0.0
  %12474 = vmatpush1.msra.mxu0 0.0
  %12475 = vmatprep.subr.mxu0 0.0
  %12476 = vmatpush1.msra.mxu0 0.0
  %12477 = vmatprep.subr.mxu0 0.0
  %12478 = vmatpush1.msra.mxu0 %v12445
  %12479 = vmatprep.subr.mxu0 0.0
  %12480 = vmatpush1.msra.mxu0 %v12444
  %12481 = vmatprep.subr.mxu0 0.0
  %12482 = vmatpush2.msra.mxu0 0.0
  %12483 = vmatprep.subr.mxu0 0.0
  %12484 = vmatpush2.msra.mxu0 0.0
  %12485 = vmatprep.subr.mxu0 0.0
  %12486 = vmatpush2.msra.mxu0 0.0
  %12487 = vmatprep.subr.mxu0 0.0
  %12488 = vmatpush2.msra.mxu0 0.0
  %12489 = vmatprep.subr.mxu0 0.0
  %12490 = vmatpush2.msra.mxu0 0.0
  %12491 = vmatprep.subr.mxu0 0.0
  %12492 = vmatpush2.msra.mxu0 0.0
  %12493 = vmatprep.subr.mxu0 0.0
  %12494 = vmatpush2.msra.mxu0 0.0
  %12495 = vmatprep.subr.mxu0 0.0
  %12496 = vmatpush2.msra.mxu0 0.0
  %12497 = vmatprep.subr.mxu0 0.0
  %12498 = vmatpush2.msra.mxu0 0.0
  %12499 = vmatprep.subr.mxu0 0.0
  %12500 = vmatpush2.msra.mxu0 0.0
  %12501 = vmatprep.subr.mxu0 0.0
  %12502 = vmatpush2.msra.mxu0 0.0
  %12503 = vmatprep.subr.mxu0 0.0
  %12504 = vmatpush2.msra.mxu0 0.0
  %12505 = vmatprep.subr.mxu0 0.0
  %12506 = vmatpush2.msra.mxu0 0.0
  %12507 = vmatprep.subr.mxu0 0.0
  %12508 = vmatpush2.msra.mxu0 0.0
  %12509 = vmatprep.subr.mxu0 0.0
  %12510 = vmatpush2.msra.mxu0 0.0
  %12511 = vmatprep.subr.mxu0 0.0
  %12512 = vmatpush2.msra.mxu0 0.0
  %12513 = vmatprep.mubr.f32.mxu0 0.0
  %12514 = vmatmul.mubr.f32.gmra.mxu0 %v12447
  %v12515 = vpop.f32.mrf.mxu0
  %v12516 = vadd.f32 0.0, %v12515
  %v12517 = vpop.f32.mrf.mxu0
  %12518 = vdwg.mxu0
  %v12519 = vadd.f32 %v12442, %v12516
  %s12520 = scalar_lea.vmem %s6, 448
  %v12521 = vld [vmem:[%s12520] sm:$0xff]
  %v12522 = vld [vmem:[%s12520 + $0x8] sm:$0xff]
  %v12524 = vsel %vm10371, %v10358, 0
  %12526 = vmatprep.subr.mxu0 0.0
  %12527 = vmatpush1.msra.mxu0 0.0
  %12528 = vmatprep.subr.mxu0 0.0
  %12529 = vmatpush1.msra.mxu0 0.0
  %12530 = vmatprep.subr.mxu0 0.0
  %12531 = vmatpush1.msra.mxu0 0.0
  %12532 = vmatprep.subr.mxu0 0.0
  %12533 = vmatpush1.msra.mxu0 0.0
  %12534 = vmatprep.subr.mxu0 0.0
  %12535 = vmatpush1.msra.mxu0 0.0
  %12536 = vmatprep.subr.mxu0 0.0
  %12537 = vmatpush1.msra.mxu0 0.0
  %12538 = vmatprep.subr.mxu0 0.0
  %12539 = vmatpush1.msra.mxu0 0.0
  %12540 = vmatprep.subr.mxu0 0.0
  %12541 = vmatpush1.msra.mxu0 0.0
  %12542 = vmatprep.subr.mxu0 0.0
  %12543 = vmatpush1.msra.mxu0 0.0
  %12544 = vmatprep.subr.mxu0 0.0
  %12545 = vmatpush1.msra.mxu0 0.0
  %12546 = vmatprep.subr.mxu0 0.0
  %12547 = vmatpush1.msra.mxu0 0.0
  %12548 = vmatprep.subr.mxu0 0.0
  %12549 = vmatpush1.msra.mxu0 0.0
  %12550 = vmatprep.subr.mxu0 0.0
  %12551 = vmatpush1.msra.mxu0 0.0
  %12552 = vmatprep.subr.mxu0 0.0
  %12553 = vmatpush1.msra.mxu0 0.0
  %12554 = vmatprep.subr.mxu0 0.0
  %12555 = vmatpush1.msra.mxu0 %v12522
  %12556 = vmatprep.subr.mxu0 0.0
  %12557 = vmatpush1.msra.mxu0 %v12521
  %12558 = vmatprep.subr.mxu0 0.0
  %12559 = vmatpush2.msra.mxu0 0.0
  %12560 = vmatprep.subr.mxu0 0.0
  %12561 = vmatpush2.msra.mxu0 0.0
  %12562 = vmatprep.subr.mxu0 0.0
  %12563 = vmatpush2.msra.mxu0 0.0
  %12564 = vmatprep.subr.mxu0 0.0
  %12565 = vmatpush2.msra.mxu0 0.0
  %12566 = vmatprep.subr.mxu0 0.0
  %12567 = vmatpush2.msra.mxu0 0.0
  %12568 = vmatprep.subr.mxu0 0.0
  %12569 = vmatpush2.msra.mxu0 0.0
  %12570 = vmatprep.subr.mxu0 0.0
  %12571 = vmatpush2.msra.mxu0 0.0
  %12572 = vmatprep.subr.mxu0 0.0
  %12573 = vmatpush2.msra.mxu0 0.0
  %12574 = vmatprep.subr.mxu0 0.0
  %12575 = vmatpush2.msra.mxu0 0.0
  %12576 = vmatprep.subr.mxu0 0.0
  %12577 = vmatpush2.msra.mxu0 0.0
  %12578 = vmatprep.subr.mxu0 0.0
  %12579 = vmatpush2.msra.mxu0 0.0
  %12580 = vmatprep.subr.mxu0 0.0
  %12581 = vmatpush2.msra.mxu0 0.0
  %12582 = vmatprep.subr.mxu0 0.0
  %12583 = vmatpush2.msra.mxu0 0.0
  %12584 = vmatprep.subr.mxu0 0.0
  %12585 = vmatpush2.msra.mxu0 0.0
  %12586 = vmatprep.subr.mxu0 0.0
  %12587 = vmatpush2.msra.mxu0 0.0
  %12588 = vmatprep.subr.mxu0 0.0
  %12589 = vmatpush2.msra.mxu0 0.0
  %12590 = vmatprep.mubr.f32.mxu0 0.0
  %12591 = vmatmul.mubr.f32.gmra.mxu0 %v12524
  %v12592 = vpop.f32.mrf.mxu0
  %v12593 = vadd.f32 0.0, %v12592
  %v12594 = vpop.f32.mrf.mxu0
  %12595 = vdwg.mxu0
  %v12596 = vadd.f32 %v12519, %v12593
  %s12597 = scalar_lea.vmem %s6, 464
  %v12598 = vld [vmem:[%s12597] sm:$0xff]
  %v12599 = vld [vmem:[%s12597 + $0x8] sm:$0xff]
  %v12601 = vsel %vm10371, %v10359, 0
  %12603 = vmatprep.subr.mxu0 0.0
  %12604 = vmatpush1.msra.mxu0 0.0
  %12605 = vmatprep.subr.mxu0 0.0
  %12606 = vmatpush1.msra.mxu0 0.0
  %12607 = vmatprep.subr.mxu0 0.0
  %12608 = vmatpush1.msra.mxu0 0.0
  %12609 = vmatprep.subr.mxu0 0.0
  %12610 = vmatpush1.msra.mxu0 0.0
  %12611 = vmatprep.subr.mxu0 0.0
  %12612 = vmatpush1.msra.mxu0 0.0
  %12613 = vmatprep.subr.mxu0 0.0
  %12614 = vmatpush1.msra.mxu0 0.0
  %12615 = vmatprep.subr.mxu0 0.0
  %12616 = vmatpush1.msra.mxu0 0.0
  %12617 = vmatprep.subr.mxu0 0.0
  %12618 = vmatpush1.msra.mxu0 0.0
  %12619 = vmatprep.subr.mxu0 0.0
  %12620 = vmatpush1.msra.mxu0 0.0
  %12621 = vmatprep.subr.mxu0 0.0
  %12622 = vmatpush1.msra.mxu0 0.0
  %12623 = vmatprep.subr.mxu0 0.0
  %12624 = vmatpush1.msra.mxu0 0.0
  %12625 = vmatprep.subr.mxu0 0.0
  %12626 = vmatpush1.msra.mxu0 0.0
  %12627 = vmatprep.subr.mxu0 0.0
  %12628 = vmatpush1.msra.mxu0 0.0
  %12629 = vmatprep.subr.mxu0 0.0
  %12630 = vmatpush1.msra.mxu0 0.0
  %12631 = vmatprep.subr.mxu0 0.0
  %12632 = vmatpush1.msra.mxu0 %v12599
  %12633 = vmatprep.subr.mxu0 0.0
  %12634 = vmatpush1.msra.mxu0 %v12598
  %12635 = vmatprep.subr.mxu0 0.0
  %12636 = vmatpush2.msra.mxu0 0.0
  %12637 = vmatprep.subr.mxu0 0.0
  %12638 = vmatpush2.msra.mxu0 0.0
  %12639 = vmatprep.subr.mxu0 0.0
  %12640 = vmatpush2.msra.mxu0 0.0
  %12641 = vmatprep.subr.mxu0 0.0
  %12642 = vmatpush2.msra.mxu0 0.0
  %12643 = vmatprep.subr.mxu0 0.0
  %12644 = vmatpush2.msra.mxu0 0.0
  %12645 = vmatprep.subr.mxu0 0.0
  %12646 = vmatpush2.msra.mxu0 0.0
  %12647 = vmatprep.subr.mxu0 0.0
  %12648 = vmatpush2.msra.mxu0 0.0
  %12649 = vmatprep.subr.mxu0 0.0
  %12650 = vmatpush2.msra.mxu0 0.0
  %12651 = vmatprep.subr.mxu0 0.0
  %12652 = vmatpush2.msra.mxu0 0.0
  %12653 = vmatprep.subr.mxu0 0.0
  %12654 = vmatpush2.msra.mxu0 0.0
  %12655 = vmatprep.subr.mxu0 0.0
  %12656 = vmatpush2.msra.mxu0 0.0
  %12657 = vmatprep.subr.mxu0 0.0
  %12658 = vmatpush2.msra.mxu0 0.0
  %12659 = vmatprep.subr.mxu0 0.0
  %12660 = vmatpush2.msra.mxu0 0.0
  %12661 = vmatprep.subr.mxu0 0.0
  %12662 = vmatpush2.msra.mxu0 0.0
  %12663 = vmatprep.subr.mxu0 0.0
  %12664 = vmatpush2.msra.mxu0 0.0
  %12665 = vmatprep.subr.mxu0 0.0
  %12666 = vmatpush2.msra.mxu0 0.0
  %12667 = vmatprep.mubr.f32.mxu0 0.0
  %12668 = vmatmul.mubr.f32.gmra.mxu0 %v12601
  %v12669 = vpop.f32.mrf.mxu0
  %v12670 = vadd.f32 0.0, %v12669
  %v12671 = vpop.f32.mrf.mxu0
  %12672 = vdwg.mxu0
  %v12673 = vadd.f32 %v12596, %v12670
  %s12674 = scalar_lea.vmem %s6, 480
  %v12675 = vld [vmem:[%s12674] sm:$0xff]
  %v12676 = vld [vmem:[%s12674 + $0x8] sm:$0xff]
  %v12678 = vsel %vm10371, %v10360, 0
  %12680 = vmatprep.subr.mxu0 0.0
  %12681 = vmatpush1.msra.mxu0 0.0
  %12682 = vmatprep.subr.mxu0 0.0
  %12683 = vmatpush1.msra.mxu0 0.0
  %12684 = vmatprep.subr.mxu0 0.0
  %12685 = vmatpush1.msra.mxu0 0.0
  %12686 = vmatprep.subr.mxu0 0.0
  %12687 = vmatpush1.msra.mxu0 0.0
  %12688 = vmatprep.subr.mxu0 0.0
  %12689 = vmatpush1.msra.mxu0 0.0
  %12690 = vmatprep.subr.mxu0 0.0
  %12691 = vmatpush1.msra.mxu0 0.0
  %12692 = vmatprep.subr.mxu0 0.0
  %12693 = vmatpush1.msra.mxu0 0.0
  %12694 = vmatprep.subr.mxu0 0.0
  %12695 = vmatpush1.msra.mxu0 0.0
  %12696 = vmatprep.subr.mxu0 0.0
  %12697 = vmatpush1.msra.mxu0 0.0
  %12698 = vmatprep.subr.mxu0 0.0
  %12699 = vmatpush1.msra.mxu0 0.0
  %12700 = vmatprep.subr.mxu0 0.0
  %12701 = vmatpush1.msra.mxu0 0.0
  %12702 = vmatprep.subr.mxu0 0.0
  %12703 = vmatpush1.msra.mxu0 0.0
  %12704 = vmatprep.subr.mxu0 0.0
  %12705 = vmatpush1.msra.mxu0 0.0
  %12706 = vmatprep.subr.mxu0 0.0
  %12707 = vmatpush1.msra.mxu0 0.0
  %12708 = vmatprep.subr.mxu0 0.0
  %12709 = vmatpush1.msra.mxu0 %v12676
  %12710 = vmatprep.subr.mxu0 0.0
  %12711 = vmatpush1.msra.mxu0 %v12675
  %12712 = vmatprep.subr.mxu0 0.0
  %12713 = vmatpush2.msra.mxu0 0.0
  %12714 = vmatprep.subr.mxu0 0.0
  %12715 = vmatpush2.msra.mxu0 0.0
  %12716 = vmatprep.subr.mxu0 0.0
  %12717 = vmatpush2.msra.mxu0 0.0
  %12718 = vmatprep.subr.mxu0 0.0
  %12719 = vmatpush2.msra.mxu0 0.0
  %12720 = vmatprep.subr.mxu0 0.0
  %12721 = vmatpush2.msra.mxu0 0.0
  %12722 = vmatprep.subr.mxu0 0.0
  %12723 = vmatpush2.msra.mxu0 0.0
  %12724 = vmatprep.subr.mxu0 0.0
  %12725 = vmatpush2.msra.mxu0 0.0
  %12726 = vmatprep.subr.mxu0 0.0
  %12727 = vmatpush2.msra.mxu0 0.0
  %12728 = vmatprep.subr.mxu0 0.0
  %12729 = vmatpush2.msra.mxu0 0.0
  %12730 = vmatprep.subr.mxu0 0.0
  %12731 = vmatpush2.msra.mxu0 0.0
  %12732 = vmatprep.subr.mxu0 0.0
  %12733 = vmatpush2.msra.mxu0 0.0
  %12734 = vmatprep.subr.mxu0 0.0
  %12735 = vmatpush2.msra.mxu0 0.0
  %12736 = vmatprep.subr.mxu0 0.0
  %12737 = vmatpush2.msra.mxu0 0.0
  %12738 = vmatprep.subr.mxu0 0.0
  %12739 = vmatpush2.msra.mxu0 0.0
  %12740 = vmatprep.subr.mxu0 0.0
  %12741 = vmatpush2.msra.mxu0 0.0
  %12742 = vmatprep.subr.mxu0 0.0
  %12743 = vmatpush2.msra.mxu0 0.0
  %12744 = vmatprep.mubr.f32.mxu0 0.0
  %12745 = vmatmul.mubr.f32.gmra.mxu0 %v12678
  %v12746 = vpop.f32.mrf.mxu0
  %v12747 = vadd.f32 0.0, %v12746
  %v12748 = vpop.f32.mrf.mxu0
  %12749 = vdwg.mxu0
  %v12750 = vadd.f32 %v12673, %v12747
  %s12751 = scalar_lea.vmem %s6, 496
  %v12752 = vld [vmem:[%s12751] sm:$0xff]
  %v12753 = vld [vmem:[%s12751 + $0x8] sm:$0xff]
  %v12755 = vsel %vm10371, %v10361, 0
  %12757 = vmatprep.subr.mxu0 0.0
  %12758 = vmatpush1.msra.mxu0 0.0
  %12759 = vmatprep.subr.mxu0 0.0
  %12760 = vmatpush1.msra.mxu0 0.0
  %12761 = vmatprep.subr.mxu0 0.0
  %12762 = vmatpush1.msra.mxu0 0.0
  %12763 = vmatprep.subr.mxu0 0.0
  %12764 = vmatpush1.msra.mxu0 0.0
  %12765 = vmatprep.subr.mxu0 0.0
  %12766 = vmatpush1.msra.mxu0 0.0
  %12767 = vmatprep.subr.mxu0 0.0
  %12768 = vmatpush1.msra.mxu0 0.0
  %12769 = vmatprep.subr.mxu0 0.0
  %12770 = vmatpush1.msra.mxu0 0.0
  %12771 = vmatprep.subr.mxu0 0.0
  %12772 = vmatpush1.msra.mxu0 0.0
  %12773 = vmatprep.subr.mxu0 0.0
  %12774 = vmatpush1.msra.mxu0 0.0
  %12775 = vmatprep.subr.mxu0 0.0
  %12776 = vmatpush1.msra.mxu0 0.0
  %12777 = vmatprep.subr.mxu0 0.0
  %12778 = vmatpush1.msra.mxu0 0.0
  %12779 = vmatprep.subr.mxu0 0.0
  %12780 = vmatpush1.msra.mxu0 0.0
  %12781 = vmatprep.subr.mxu0 0.0
  %12782 = vmatpush1.msra.mxu0 0.0
  %12783 = vmatprep.subr.mxu0 0.0
  %12784 = vmatpush1.msra.mxu0 0.0
  %12785 = vmatprep.subr.mxu0 0.0
  %12786 = vmatpush1.msra.mxu0 %v12753
  %12787 = vmatprep.subr.mxu0 0.0
  %12788 = vmatpush1.msra.mxu0 %v12752
  %12789 = vmatprep.subr.mxu0 0.0
  %12790 = vmatpush2.msra.mxu0 0.0
  %12791 = vmatprep.subr.mxu0 0.0
  %12792 = vmatpush2.msra.mxu0 0.0
  %12793 = vmatprep.subr.mxu0 0.0
  %12794 = vmatpush2.msra.mxu0 0.0
  %12795 = vmatprep.subr.mxu0 0.0
  %12796 = vmatpush2.msra.mxu0 0.0
  %12797 = vmatprep.subr.mxu0 0.0
  %12798 = vmatpush2.msra.mxu0 0.0
  %12799 = vmatprep.subr.mxu0 0.0
  %12800 = vmatpush2.msra.mxu0 0.0
  %12801 = vmatprep.subr.mxu0 0.0
  %12802 = vmatpush2.msra.mxu0 0.0
  %12803 = vmatprep.subr.mxu0 0.0
  %12804 = vmatpush2.msra.mxu0 0.0
  %12805 = vmatprep.subr.mxu0 0.0
  %12806 = vmatpush2.msra.mxu0 0.0
  %12807 = vmatprep.subr.mxu0 0.0
  %12808 = vmatpush2.msra.mxu0 0.0
  %12809 = vmatprep.subr.mxu0 0.0
  %12810 = vmatpush2.msra.mxu0 0.0
  %12811 = vmatprep.subr.mxu0 0.0
  %12812 = vmatpush2.msra.mxu0 0.0
  %12813 = vmatprep.subr.mxu0 0.0
  %12814 = vmatpush2.msra.mxu0 0.0
  %12815 = vmatprep.subr.mxu0 0.0
  %12816 = vmatpush2.msra.mxu0 0.0
  %12817 = vmatprep.subr.mxu0 0.0
  %12818 = vmatpush2.msra.mxu0 0.0
  %12819 = vmatprep.subr.mxu0 0.0
  %12820 = vmatpush2.msra.mxu0 0.0
  %12821 = vmatprep.mubr.f32.mxu0 0.0
  %12822 = vmatmul.mubr.f32.gmra.mxu0 %v12755
  %v12823 = vpop.f32.mrf.mxu0
  %v12824 = vadd.f32 0.0, %v12823
  %v12825 = vpop.f32.mrf.mxu0
  %12826 = vdwg.mxu0
  %v12827 = vadd.f32 %v12750, %v12824
  %s12828 = scalar_lea.vmem %s6, 512
  %v12829 = vld [vmem:[%s12828] sm:$0xff]
  %v12830 = vld [vmem:[%s12828 + $0x8] sm:$0xff]
  %v12832 = vsel %vm10371, %v10362, 0
  %12834 = vmatprep.subr.mxu0 0.0
  %12835 = vmatpush1.msra.mxu0 0.0
  %12836 = vmatprep.subr.mxu0 0.0
  %12837 = vmatpush1.msra.mxu0 0.0
  %12838 = vmatprep.subr.mxu0 0.0
  %12839 = vmatpush1.msra.mxu0 0.0
  %12840 = vmatprep.subr.mxu0 0.0
  %12841 = vmatpush1.msra.mxu0 0.0
  %12842 = vmatprep.subr.mxu0 0.0
  %12843 = vmatpush1.msra.mxu0 0.0
  %12844 = vmatprep.subr.mxu0 0.0
  %12845 = vmatpush1.msra.mxu0 0.0
  %12846 = vmatprep.subr.mxu0 0.0
  %12847 = vmatpush1.msra.mxu0 0.0
  %12848 = vmatprep.subr.mxu0 0.0
  %12849 = vmatpush1.msra.mxu0 0.0
  %12850 = vmatprep.subr.mxu0 0.0
  %12851 = vmatpush1.msra.mxu0 0.0
  %12852 = vmatprep.subr.mxu0 0.0
  %12853 = vmatpush1.msra.mxu0 0.0
  %12854 = vmatprep.subr.mxu0 0.0
  %12855 = vmatpush1.msra.mxu0 0.0
  %12856 = vmatprep.subr.mxu0 0.0
  %12857 = vmatpush1.msra.mxu0 0.0
  %12858 = vmatprep.subr.mxu0 0.0
  %12859 = vmatpush1.msra.mxu0 0.0
  %12860 = vmatprep.subr.mxu0 0.0
  %12861 = vmatpush1.msra.mxu0 0.0
  %12862 = vmatprep.subr.mxu0 0.0
  %12863 = vmatpush1.msra.mxu0 %v12830
  %12864 = vmatprep.subr.mxu0 0.0
  %12865 = vmatpush1.msra.mxu0 %v12829
  %12866 = vmatprep.subr.mxu0 0.0
  %12867 = vmatpush2.msra.mxu0 0.0
  %12868 = vmatprep.subr.mxu0 0.0
  %12869 = vmatpush2.msra.mxu0 0.0
  %12870 = vmatprep.subr.mxu0 0.0
  %12871 = vmatpush2.msra.mxu0 0.0
  %12872 = vmatprep.subr.mxu0 0.0
  %12873 = vmatpush2.msra.mxu0 0.0
  %12874 = vmatprep.subr.mxu0 0.0
  %12875 = vmatpush2.msra.mxu0 0.0
  %12876 = vmatprep.subr.mxu0 0.0
  %12877 = vmatpush2.msra.mxu0 0.0
  %12878 = vmatprep.subr.mxu0 0.0
  %12879 = vmatpush2.msra.mxu0 0.0
  %12880 = vmatprep.subr.mxu0 0.0
  %12881 = vmatpush2.msra.mxu0 0.0
  %12882 = vmatprep.subr.mxu0 0.0
  %12883 = vmatpush2.msra.mxu0 0.0
  %12884 = vmatprep.subr.mxu0 0.0
  %12885 = vmatpush2.msra.mxu0 0.0
  %12886 = vmatprep.subr.mxu0 0.0
  %12887 = vmatpush2.msra.mxu0 0.0
  %12888 = vmatprep.subr.mxu0 0.0
  %12889 = vmatpush2.msra.mxu0 0.0
  %12890 = vmatprep.subr.mxu0 0.0
  %12891 = vmatpush2.msra.mxu0 0.0
  %12892 = vmatprep.subr.mxu0 0.0
  %12893 = vmatpush2.msra.mxu0 0.0
  %12894 = vmatprep.subr.mxu0 0.0
  %12895 = vmatpush2.msra.mxu0 0.0
  %12896 = vmatprep.subr.mxu0 0.0
  %12897 = vmatpush2.msra.mxu0 0.0
  %12898 = vmatprep.mubr.f32.mxu0 0.0
  %12899 = vmatmul.mubr.f32.gmra.mxu0 %v12832
  %v12900 = vpop.f32.mrf.mxu0
  %v12901 = vadd.f32 0.0, %v12900
  %v12902 = vpop.f32.mrf.mxu0
  %12903 = vdwg.mxu0
  %v12904 = vadd.f32 %v12827, %v12901
  %s12905 = scalar_lea.vmem %s6, 528
  %v12906 = vld [vmem:[%s12905] sm:$0xff]
  %v12907 = vld [vmem:[%s12905 + $0x8] sm:$0xff]
  %v12909 = vsel %vm10371, %v10363, 0
  %12911 = vmatprep.subr.mxu0 0.0
  %12912 = vmatpush1.msra.mxu0 0.0
  %12913 = vmatprep.subr.mxu0 0.0
  %12914 = vmatpush1.msra.mxu0 0.0
  %12915 = vmatprep.subr.mxu0 0.0
  %12916 = vmatpush1.msra.mxu0 0.0
  %12917 = vmatprep.subr.mxu0 0.0
  %12918 = vmatpush1.msra.mxu0 0.0
  %12919 = vmatprep.subr.mxu0 0.0
  %12920 = vmatpush1.msra.mxu0 0.0
  %12921 = vmatprep.subr.mxu0 0.0
  %12922 = vmatpush1.msra.mxu0 0.0
  %12923 = vmatprep.subr.mxu0 0.0
  %12924 = vmatpush1.msra.mxu0 0.0
  %12925 = vmatprep.subr.mxu0 0.0
  %12926 = vmatpush1.msra.mxu0 0.0
  %12927 = vmatprep.subr.mxu0 0.0
  %12928 = vmatpush1.msra.mxu0 0.0
  %12929 = vmatprep.subr.mxu0 0.0
  %12930 = vmatpush1.msra.mxu0 0.0
  %12931 = vmatprep.subr.mxu0 0.0
  %12932 = vmatpush1.msra.mxu0 0.0
  %12933 = vmatprep.subr.mxu0 0.0
  %12934 = vmatpush1.msra.mxu0 0.0
  %12935 = vmatprep.subr.mxu0 0.0
  %12936 = vmatpush1.msra.mxu0 0.0
  %12937 = vmatprep.subr.mxu0 0.0
  %12938 = vmatpush1.msra.mxu0 0.0
  %12939 = vmatprep.subr.mxu0 0.0
  %12940 = vmatpush1.msra.mxu0 %v12907
  %12941 = vmatprep.subr.mxu0 0.0
  %12942 = vmatpush1.msra.mxu0 %v12906
  %12943 = vmatprep.subr.mxu0 0.0
  %12944 = vmatpush2.msra.mxu0 0.0
  %12945 = vmatprep.subr.mxu0 0.0
  %12946 = vmatpush2.msra.mxu0 0.0
  %12947 = vmatprep.subr.mxu0 0.0
  %12948 = vmatpush2.msra.mxu0 0.0
  %12949 = vmatprep.subr.mxu0 0.0
  %12950 = vmatpush2.msra.mxu0 0.0
  %12951 = vmatprep.subr.mxu0 0.0
  %12952 = vmatpush2.msra.mxu0 0.0
  %12953 = vmatprep.subr.mxu0 0.0
  %12954 = vmatpush2.msra.mxu0 0.0
  %12955 = vmatprep.subr.mxu0 0.0
  %12956 = vmatpush2.msra.mxu0 0.0
  %12957 = vmatprep.subr.mxu0 0.0
  %12958 = vmatpush2.msra.mxu0 0.0
  %12959 = vmatprep.subr.mxu0 0.0
  %12960 = vmatpush2.msra.mxu0 0.0
  %12961 = vmatprep.subr.mxu0 0.0
  %12962 = vmatpush2.msra.mxu0 0.0
  %12963 = vmatprep.subr.mxu0 0.0
  %12964 = vmatpush2.msra.mxu0 0.0
  %12965 = vmatprep.subr.mxu0 0.0
  %12966 = vmatpush2.msra.mxu0 0.0
  %12967 = vmatprep.subr.mxu0 0.0
  %12968 = vmatpush2.msra.mxu0 0.0
  %12969 = vmatprep.subr.mxu0 0.0
  %12970 = vmatpush2.msra.mxu0 0.0
  %12971 = vmatprep.subr.mxu0 0.0
  %12972 = vmatpush2.msra.mxu0 0.0
  %12973 = vmatprep.subr.mxu0 0.0
  %12974 = vmatpush2.msra.mxu0 0.0
  %12975 = vmatprep.mubr.f32.mxu0 0.0
  %12976 = vmatmul.mubr.f32.gmra.mxu0 %v12909
  %v12977 = vpop.f32.mrf.mxu0
  %v12978 = vadd.f32 0.0, %v12977
  %v12979 = vpop.f32.mrf.mxu0
  %12980 = vdwg.mxu0
  %v12981 = vadd.f32 %v12904, %v12978
  %s12982 = scalar_lea.vmem %s6, 544
  %v12983 = vld [vmem:[%s12982] sm:$0xff]
  %v12984 = vld [vmem:[%s12982 + $0x8] sm:$0xff]
  %v12986 = vsel %vm10371, %v10364, 0
  %12988 = vmatprep.subr.mxu0 0.0
  %12989 = vmatpush1.msra.mxu0 0.0
  %12990 = vmatprep.subr.mxu0 0.0
  %12991 = vmatpush1.msra.mxu0 0.0
  %12992 = vmatprep.subr.mxu0 0.0
  %12993 = vmatpush1.msra.mxu0 0.0
  %12994 = vmatprep.subr.mxu0 0.0
  %12995 = vmatpush1.msra.mxu0 0.0
  %12996 = vmatprep.subr.mxu0 0.0
  %12997 = vmatpush1.msra.mxu0 0.0
  %12998 = vmatprep.subr.mxu0 0.0
  %12999 = vmatpush1.msra.mxu0 0.0
  %13000 = vmatprep.subr.mxu0 0.0
  %13001 = vmatpush1.msra.mxu0 0.0
  %13002 = vmatprep.subr.mxu0 0.0
  %13003 = vmatpush1.msra.mxu0 0.0
  %13004 = vmatprep.subr.mxu0 0.0
  %13005 = vmatpush1.msra.mxu0 0.0
  %13006 = vmatprep.subr.mxu0 0.0
  %13007 = vmatpush1.msra.mxu0 0.0
  %13008 = vmatprep.subr.mxu0 0.0
  %13009 = vmatpush1.msra.mxu0 0.0
  %13010 = vmatprep.subr.mxu0 0.0
  %13011 = vmatpush1.msra.mxu0 0.0
  %13012 = vmatprep.subr.mxu0 0.0
  %13013 = vmatpush1.msra.mxu0 0.0
  %13014 = vmatprep.subr.mxu0 0.0
  %13015 = vmatpush1.msra.mxu0 0.0
  %13016 = vmatprep.subr.mxu0 0.0
  %13017 = vmatpush1.msra.mxu0 %v12984
  %13018 = vmatprep.subr.mxu0 0.0
  %13019 = vmatpush1.msra.mxu0 %v12983
  %13020 = vmatprep.subr.mxu0 0.0
  %13021 = vmatpush2.msra.mxu0 0.0
  %13022 = vmatprep.subr.mxu0 0.0
  %13023 = vmatpush2.msra.mxu0 0.0
  %13024 = vmatprep.subr.mxu0 0.0
  %13025 = vmatpush2.msra.mxu0 0.0
  %13026 = vmatprep.subr.mxu0 0.0
  %13027 = vmatpush2.msra.mxu0 0.0
  %13028 = vmatprep.subr.mxu0 0.0
  %13029 = vmatpush2.msra.mxu0 0.0
  %13030 = vmatprep.subr.mxu0 0.0
  %13031 = vmatpush2.msra.mxu0 0.0
  %13032 = vmatprep.subr.mxu0 0.0
  %13033 = vmatpush2.msra.mxu0 0.0
  %13034 = vmatprep.subr.mxu0 0.0
  %13035 = vmatpush2.msra.mxu0 0.0
  %13036 = vmatprep.subr.mxu0 0.0
  %13037 = vmatpush2.msra.mxu0 0.0
  %13038 = vmatprep.subr.mxu0 0.0
  %13039 = vmatpush2.msra.mxu0 0.0
  %13040 = vmatprep.subr.mxu0 0.0
  %13041 = vmatpush2.msra.mxu0 0.0
  %13042 = vmatprep.subr.mxu0 0.0
  %13043 = vmatpush2.msra.mxu0 0.0
  %13044 = vmatprep.subr.mxu0 0.0
  %13045 = vmatpush2.msra.mxu0 0.0
  %13046 = vmatprep.subr.mxu0 0.0
  %13047 = vmatpush2.msra.mxu0 0.0
  %13048 = vmatprep.subr.mxu0 0.0
  %13049 = vmatpush2.msra.mxu0 0.0
  %13050 = vmatprep.subr.mxu0 0.0
  %13051 = vmatpush2.msra.mxu0 0.0
  %13052 = vmatprep.mubr.f32.mxu0 0.0
  %13053 = vmatmul.mubr.f32.gmra.mxu0 %v12986
  %v13054 = vpop.f32.mrf.mxu0
  %v13055 = vadd.f32 0.0, %v13054
  %v13056 = vpop.f32.mrf.mxu0
  %13057 = vdwg.mxu0
  %v13058 = vadd.f32 %v12981, %v13055
  %s13059 = scalar_lea.vmem %s6, 560
  %v13060 = vld [vmem:[%s13059] sm:$0xff]
  %v13061 = vld [vmem:[%s13059 + $0x8] sm:$0xff]
  %v13063 = vsel %vm10371, %v10365, 0
  %13065 = vmatprep.subr.mxu0 0.0
  %13066 = vmatpush1.msra.mxu0 0.0
  %13067 = vmatprep.subr.mxu0 0.0
  %13068 = vmatpush1.msra.mxu0 0.0
  %13069 = vmatprep.subr.mxu0 0.0
  %13070 = vmatpush1.msra.mxu0 0.0
  %13071 = vmatprep.subr.mxu0 0.0
  %13072 = vmatpush1.msra.mxu0 0.0
  %13073 = vmatprep.subr.mxu0 0.0
  %13074 = vmatpush1.msra.mxu0 0.0
  %13075 = vmatprep.subr.mxu0 0.0
  %13076 = vmatpush1.msra.mxu0 0.0
  %13077 = vmatprep.subr.mxu0 0.0
  %13078 = vmatpush1.msra.mxu0 0.0
  %13079 = vmatprep.subr.mxu0 0.0
  %13080 = vmatpush1.msra.mxu0 0.0
  %13081 = vmatprep.subr.mxu0 0.0
  %13082 = vmatpush1.msra.mxu0 0.0
  %13083 = vmatprep.subr.mxu0 0.0
  %13084 = vmatpush1.msra.mxu0 0.0
  %13085 = vmatprep.subr.mxu0 0.0
  %13086 = vmatpush1.msra.mxu0 0.0
  %13087 = vmatprep.subr.mxu0 0.0
  %13088 = vmatpush1.msra.mxu0 0.0
  %13089 = vmatprep.subr.mxu0 0.0
  %13090 = vmatpush1.msra.mxu0 0.0
  %13091 = vmatprep.subr.mxu0 0.0
  %13092 = vmatpush1.msra.mxu0 0.0
  %13093 = vmatprep.subr.mxu0 0.0
  %13094 = vmatpush1.msra.mxu0 %v13061
  %13095 = vmatprep.subr.mxu0 0.0
  %13096 = vmatpush1.msra.mxu0 %v13060
  %13097 = vmatprep.subr.mxu0 0.0
  %13098 = vmatpush2.msra.mxu0 0.0
  %13099 = vmatprep.subr.mxu0 0.0
  %13100 = vmatpush2.msra.mxu0 0.0
  %13101 = vmatprep.subr.mxu0 0.0
  %13102 = vmatpush2.msra.mxu0 0.0
  %13103 = vmatprep.subr.mxu0 0.0
  %13104 = vmatpush2.msra.mxu0 0.0
  %13105 = vmatprep.subr.mxu0 0.0
  %13106 = vmatpush2.msra.mxu0 0.0
  %13107 = vmatprep.subr.mxu0 0.0
  %13108 = vmatpush2.msra.mxu0 0.0
  %13109 = vmatprep.subr.mxu0 0.0
  %13110 = vmatpush2.msra.mxu0 0.0
  %13111 = vmatprep.subr.mxu0 0.0
  %13112 = vmatpush2.msra.mxu0 0.0
  %13113 = vmatprep.subr.mxu0 0.0
  %13114 = vmatpush2.msra.mxu0 0.0
  %13115 = vmatprep.subr.mxu0 0.0
  %13116 = vmatpush2.msra.mxu0 0.0
  %13117 = vmatprep.subr.mxu0 0.0
  %13118 = vmatpush2.msra.mxu0 0.0
  %13119 = vmatprep.subr.mxu0 0.0
  %13120 = vmatpush2.msra.mxu0 0.0
  %13121 = vmatprep.subr.mxu0 0.0
  %13122 = vmatpush2.msra.mxu0 0.0
  %13123 = vmatprep.subr.mxu0 0.0
  %13124 = vmatpush2.msra.mxu0 0.0
  %13125 = vmatprep.subr.mxu0 0.0
  %13126 = vmatpush2.msra.mxu0 0.0
  %13127 = vmatprep.subr.mxu0 0.0
  %13128 = vmatpush2.msra.mxu0 0.0
  %13129 = vmatprep.mubr.f32.mxu0 0.0
  %13130 = vmatmul.mubr.f32.gmra.mxu0 %v13063
  %v13131 = vpop.f32.mrf.mxu0
  %v13132 = vadd.f32 0.0, %v13131
  %v13133 = vpop.f32.mrf.mxu0
  %13134 = vdwg.mxu0
  %v13135 = vadd.f32 %v13058, %v13132
  %v13136 = vld [vmem:[%s7] sm:$0x1]
  %v13138 = vlaneseq
  %v13139 = vshrl.u32 %v13138, 7
  %v13140 = vsub.s32 0, %v13139
  %v13141 = vrot.slane %v13136, %v13140
  %v13143 = vadd.f32 %v13135, %v13141
  %v13144 = vmax.f32 %v13143, 0.0
  %v13145 = vld [vmem:[%s8] sm:$0xff]
  %v13146 = vld [vmem:[%s8 + $0x8] sm:$0xff]
  %v13147 = vld [vmem:[%s8 + $0x10] sm:$0xff]
  %v13148 = vld [vmem:[%s8 + $0x18] sm:$0xff]
  %v13149 = vld [vmem:[%s8 + $0x20] sm:$0xff]
  %v13150 = vld [vmem:[%s8 + $0x28] sm:$0xff]
  %v13151 = vld [vmem:[%s8 + $0x30] sm:$0xff]
  %v13152 = vld [vmem:[%s8 + $0x38] sm:$0xff]
  %v13153 = vld [vmem:[%s8 + $0x40] sm:$0xff]
  %v13154 = vld [vmem:[%s8 + $0x48] sm:$0xff]
  %v13155 = vld [vmem:[%s8 + $0x50] sm:$0xff]
  %v13156 = vld [vmem:[%s8 + $0x58] sm:$0xff]
  %v13157 = vld [vmem:[%s8 + $0x60] sm:$0xff]
  %v13158 = vld [vmem:[%s8 + $0x68] sm:$0xff]
  %v13159 = vld [vmem:[%s8 + $0x70] sm:$0xff]
  %v13160 = vld [vmem:[%s8 + $0x78] sm:$0xff]
  %v13161 = vld [vmem:[%s9] sm:$0x1]
  %v13163 = vlaneseq
  %v13164 = vshrl.u32 %v13163, 7
  %v13165 = vsub.s32 0, %v13164
  %v13166 = vrot.slane %v13161, %v13165
  %13168 = vmatprep.subr.mxu0 0.0
  %13169 = vmatpush1.msra.mxu0 %v13160
  %13170 = vmatprep.subr.mxu0 0.0
  %13171 = vmatpush1.msra.mxu0 %v13159
  %13172 = vmatprep.subr.mxu0 0.0
  %13173 = vmatpush1.msra.mxu0 %v13158
  %13174 = vmatprep.subr.mxu0 0.0
  %13175 = vmatpush1.msra.mxu0 %v13157
  %13176 = vmatprep.subr.mxu0 0.0
  %13177 = vmatpush1.msra.mxu0 %v13156
  %13178 = vmatprep.subr.mxu0 0.0
  %13179 = vmatpush1.msra.mxu0 %v13155
  %13180 = vmatprep.subr.mxu0 0.0
  %13181 = vmatpush1.msra.mxu0 %v13154
  %13182 = vmatprep.subr.mxu0 0.0
  %13183 = vmatpush1.msra.mxu0 %v13153
  %13184 = vmatprep.subr.mxu0 0.0
  %13185 = vmatpush1.msra.mxu0 %v13152
  %13186 = vmatprep.subr.mxu0 0.0
  %13187 = vmatpush1.msra.mxu0 %v13151
  %13188 = vmatprep.subr.mxu0 0.0
  %13189 = vmatpush1.msra.mxu0 %v13150
  %13190 = vmatprep.subr.mxu0 0.0
  %13191 = vmatpush1.msra.mxu0 %v13149
  %13192 = vmatprep.subr.mxu0 0.0
  %13193 = vmatpush1.msra.mxu0 %v13148
  %13194 = vmatprep.subr.mxu0 0.0
  %13195 = vmatpush1.msra.mxu0 %v13147
  %13196 = vmatprep.subr.mxu0 0.0
  %13197 = vmatpush1.msra.mxu0 %v13146
  %13198 = vmatprep.subr.mxu0 0.0
  %13199 = vmatpush1.msra.mxu0 %v13145
  %13200 = vmatprep.subr.mxu0 0.0
  %13201 = vmatpush2.msra.mxu0 0.0
  %13202 = vmatprep.subr.mxu0 0.0
  %13203 = vmatpush2.msra.mxu0 0.0
  %13204 = vmatprep.subr.mxu0 0.0
  %13205 = vmatpush2.msra.mxu0 0.0
  %13206 = vmatprep.subr.mxu0 0.0
  %13207 = vmatpush2.msra.mxu0 0.0
  %13208 = vmatprep.subr.mxu0 0.0
  %13209 = vmatpush2.msra.mxu0 0.0
  %13210 = vmatprep.subr.mxu0 0.0
  %13211 = vmatpush2.msra.mxu0 0.0
  %13212 = vmatprep.subr.mxu0 0.0
  %13213 = vmatpush2.msra.mxu0 0.0
  %13214 = vmatprep.subr.mxu0 0.0
  %13215 = vmatpush2.msra.mxu0 0.0
  %13216 = vmatprep.subr.mxu0 0.0
  %13217 = vmatpush2.msra.mxu0 0.0
  %13218 = vmatprep.subr.mxu0 0.0
  %13219 = vmatpush2.msra.mxu0 0.0
  %13220 = vmatprep.subr.mxu0 0.0
  %13221 = vmatpush2.msra.mxu0 0.0
  %13222 = vmatprep.subr.mxu0 0.0
  %13223 = vmatpush2.msra.mxu0 0.0
  %13224 = vmatprep.subr.mxu0 0.0
  %13225 = vmatpush2.msra.mxu0 0.0
  %13226 = vmatprep.subr.mxu0 0.0
  %13227 = vmatpush2.msra.mxu0 0.0
  %13228 = vmatprep.subr.mxu0 0.0
  %13229 = vmatpush2.msra.mxu0 0.0
  %13230 = vmatprep.subr.mxu0 0.0
  %13231 = vmatpush2.msra.mxu0 0.0
  %13232 = vmatprep.mubr.f32.mxu0 0.0
  %13233 = vmatmul.mubr.f32.gmra.mxu0 %v13144
  %v13234 = vpop.f32.mrf.mxu0
  %v13235 = vadd.f32 %v13166, %v13234
  %v13236 = vpop.f32.mrf.mxu0
  %13237 = vdwg.mxu0
  %v13238 = vmax.f32 %v13235, 0.0
  %v13239 = vld [vmem:[%s10] sm:$0xff]
  %v13240 = vld [vmem:[%s10 + $0x8] sm:$0xff]
  %v13241 = vld [vmem:[%s10 + $0x10] sm:$0xff]
  %v13242 = vld [vmem:[%s10 + $0x18] sm:$0xff]
  %v13243 = vld [vmem:[%s10 + $0x20] sm:$0xff]
  %v13244 = vld [vmem:[%s10 + $0x28] sm:$0xff]
  %v13245 = vld [vmem:[%s10 + $0x30] sm:$0xff]
  %v13246 = vld [vmem:[%s10 + $0x38] sm:$0xff]
  %v13247 = vld [vmem:[%s10 + $0x40] sm:$0xff]
  %v13248 = vld [vmem:[%s10 + $0x48] sm:$0xff]
  %v13249 = vld [vmem:[%s10 + $0x50] sm:$0xff]
  %v13250 = vld [vmem:[%s10 + $0x58] sm:$0xff]
  %v13251 = vld [vmem:[%s10 + $0x60] sm:$0xff]
  %v13252 = vld [vmem:[%s10 + $0x68] sm:$0xff]
  %v13253 = vld [vmem:[%s10 + $0x70] sm:$0xff]
  %v13254 = vld [vmem:[%s10 + $0x78] sm:$0xff]
  %v13255 = vld [vmem:[%s11] sm:$0x1]
  %v13257 = vlaneseq
  %v13258 = vshrl.u32 %v13257, 7
  %v13259 = vsub.s32 0, %v13258
  %v13260 = vrot.slane %v13255, %v13259
  %13262 = vmatprep.subr.mxu0 0.0
  %13263 = vmatpush1.msra.mxu0 %v13254
  %13264 = vmatprep.subr.mxu0 0.0
  %13265 = vmatpush1.msra.mxu0 %v13253
  %13266 = vmatprep.subr.mxu0 0.0
  %13267 = vmatpush1.msra.mxu0 %v13252
  %13268 = vmatprep.subr.mxu0 0.0
  %13269 = vmatpush1.msra.mxu0 %v13251
  %13270 = vmatprep.subr.mxu0 0.0
  %13271 = vmatpush1.msra.mxu0 %v13250
  %13272 = vmatprep.subr.mxu0 0.0
  %13273 = vmatpush1.msra.mxu0 %v13249
  %13274 = vmatprep.subr.mxu0 0.0
  %13275 = vmatpush1.msra.mxu0 %v13248
  %13276 = vmatprep.subr.mxu0 0.0
  %13277 = vmatpush1.msra.mxu0 %v13247
  %13278 = vmatprep.subr.mxu0 0.0
  %13279 = vmatpush1.msra.mxu0 %v13246
  %13280 = vmatprep.subr.mxu0 0.0
  %13281 = vmatpush1.msra.mxu0 %v13245
  %13282 = vmatprep.subr.mxu0 0.0
  %13283 = vmatpush1.msra.mxu0 %v13244
  %13284 = vmatprep.subr.mxu0 0.0
  %13285 = vmatpush1.msra.mxu0 %v13243
  %13286 = vmatprep.subr.mxu0 0.0
  %13287 = vmatpush1.msra.mxu0 %v13242
  %13288 = vmatprep.subr.mxu0 0.0
  %13289 = vmatpush1.msra.mxu0 %v13241
  %13290 = vmatprep.subr.mxu0 0.0
  %13291 = vmatpush1.msra.mxu0 %v13240
  %13292 = vmatprep.subr.mxu0 0.0
  %13293 = vmatpush1.msra.mxu0 %v13239
  %13294 = vmatprep.subr.mxu0 0.0
  %13295 = vmatpush2.msra.mxu0 0.0
  %13296 = vmatprep.subr.mxu0 0.0
  %13297 = vmatpush2.msra.mxu0 0.0
  %13298 = vmatprep.subr.mxu0 0.0
  %13299 = vmatpush2.msra.mxu0 0.0
  %13300 = vmatprep.subr.mxu0 0.0
  %13301 = vmatpush2.msra.mxu0 0.0
  %13302 = vmatprep.subr.mxu0 0.0
  %13303 = vmatpush2.msra.mxu0 0.0
  %13304 = vmatprep.subr.mxu0 0.0
  %13305 = vmatpush2.msra.mxu0 0.0
  %13306 = vmatprep.subr.mxu0 0.0
  %13307 = vmatpush2.msra.mxu0 0.0
  %13308 = vmatprep.subr.mxu0 0.0
  %13309 = vmatpush2.msra.mxu0 0.0
  %13310 = vmatprep.subr.mxu0 0.0
  %13311 = vmatpush2.msra.mxu0 0.0
  %13312 = vmatprep.subr.mxu0 0.0
  %13313 = vmatpush2.msra.mxu0 0.0
  %13314 = vmatprep.subr.mxu0 0.0
  %13315 = vmatpush2.msra.mxu0 0.0
  %13316 = vmatprep.subr.mxu0 0.0
  %13317 = vmatpush2.msra.mxu0 0.0
  %13318 = vmatprep.subr.mxu0 0.0
  %13319 = vmatpush2.msra.mxu0 0.0
  %13320 = vmatprep.subr.mxu0 0.0
  %13321 = vmatpush2.msra.mxu0 0.0
  %13322 = vmatprep.subr.mxu0 0.0
  %13323 = vmatpush2.msra.mxu0 0.0
  %13324 = vmatprep.subr.mxu0 0.0
  %13325 = vmatpush2.msra.mxu0 0.0
  %13326 = vmatprep.mubr.f32.mxu0 0.0
  %13327 = vmatmul.mubr.f32.gmra.mxu0 %v13238
  %v13328 = vpop.f32.mrf.mxu0
  %v13329 = vadd.f32 %v13260, %v13328
  %v13330 = vpop.f32.mrf.mxu0
  %13331 = vdwg.mxu0
  %13332 = vst [vmem:[%s12] sm:$0xff] %v13329
  // Predicated region
  $region50: #{hash_model_forward.1} parent=0 // pred_check
    _
  $region51: #{hash_model_forward.1} parent=0 // pred_check_branch
    %13334 = sbr.rel (0) target = $region53
  $region52: #{hash_model_forward.1} parent=0 // pred_region
    _
  $region53: #{hash_model_forward.1} parent=0 // pred_fallthru
    _
  // Predicated region
  $region54: #{hash_model_forward.1} parent=0 // pred_check
    _
  $region55: #{hash_model_forward.1} parent=0 // pred_check_branch
    %13336 = sbr.rel (0) target = $region57
  $region56: #{hash_model_forward.1} parent=0 // pred_region
    _
  $region57: #{hash_model_forward.1} parent=0 // pred_fallthru
    _

</llo_original>
